<compile_context>
chip_gen: v7x
topology: tpu7x:2x2x1
jax: 0.10.0
libtpu: 0.0.40
codegen_flags: <defaults>
</compile_context>

<pallas_src>
import functools

import jax
import jax.numpy as jnp
from jax import lax
from jax.experimental import pallas as pl
from jax.experimental.pallas import tpu as pltpu


def _round_up(x, m):
    return (x + m - 1) // m * m


def conv_shift_dot_kernel(x_ref, w_ref, b_ref, o_ref, *, K, Wp):
    """Fused conv(3x3) + (bias + other + y), lane-dense output.

    x_ref: (1, Cin, Lin)    zero-padded image, rows flattened; Lin % 128 == 0
    w_ref: (K*K, Cout, Cin) per-tap weight matrices (tap t = kh*K + kw)
    b_ref: (Cout, 1)        effective bias  (= conv bias + other + y)
    o_ref: (1, Cout, Lout)  column p = ho*Wp + wo (full padded width); Lout % 128 == 0
    """
    Cout, L = o_ref.shape[1], o_ref.shape[2]
    xi = x_ref[0]                                            # (Cin, Lin), single VMEM load
    acc = jnp.broadcast_to(b_ref[...], (Cout, L)).astype(jnp.float32)
    for kh in range(K):
        for kw in range(K):
            off = kh * Wp + kw                               # static shift of flattened image
            tap = xi[:, off:off + L]                         # (Cin, L) shifted view
            acc = acc + jnp.dot(w_ref[kh * K + kw], tap,
                                preferred_element_type=jnp.float32)   # MXU
    o_ref[0] = acc.astype(o_ref.dtype)


@jax.jit
def model_forward(x1_nchw, weight_oihw, bias, other, y):
    """Equivalent of Model.forward(x1, other, y, padding1, padding2=None)."""
    # TODO(synk): padding1 is unused and the padding2=None branch only creates an
    # unused torch.randn tensor -> both are no-ops and omitted here.
    pad = 3                                                  # Conv2d(..., padding=3)
    N, Cin, H, W = x1_nchw.shape
    Cout, _, K, _ = weight_oihw.shape
    Hp, Wp = H + 2 * pad, W + 2 * pad
    Hout, Wout = Hp - K + 1, Wp - K + 1

    Lout = _round_up(Hout * Wp, 128)                         # lane-dense, unmasked stores
    max_off = (K - 1) * Wp + (K - 1)
    Lin = _round_up(max(Hp * Wp, max_off + Lout), 128)

    # ---- tiny glue (fused under jit, ~60 KB): spatial zero-pad + flatten + lane-pad ----
    x_pad = jnp.pad(x1_nchw, ((0, 0), (0, 0), (pad, pad), (pad, pad)))
    x_flat = jnp.pad(x_pad.reshape(N, Cin, Hp * Wp),
                     ((0, 0), (0, 0), (0, Lin - Hp * Wp)))            # (N, Cin, Lin)
    w_taps = weight_oihw.transpose(2, 3, 0, 1).reshape(K * K, Cout, Cin)
    # Fold scalars: y + (conv + other) == conv + (bias + other + y).
    # NOTE: only valid because `other` / `y` are scalars (or per-channel (Cout,)).
    b_eff = (bias + other + y).reshape(Cout, 1).astype(jnp.float32)

    cost = pl.CostEstimate(
        flops=2 * N * Cout * Cin * K * K * Lout,
        transcendentals=0,
        bytes_accessed=4 * (N * Cin * Lin + K * K * Cout * Cin + Cout + N * Cout * Lout),
    )

    kernel = functools.partial(conv_shift_dot_kernel, K=K, Wp=Wp)

    out_flat = pl.pallas_call(
        kernel,
        out_shape=jax.ShapeDtypeStruct((N, Cout, Lout), jnp.float32),
        grid=(N,),
        in_specs=[
            pl.BlockSpec((1, Cin, Lin), lambda n: (n, 0, 0)),     # padded image (flattened)
            pl.BlockSpec((K * K, Cout, Cin), lambda n: (0, 0, 0)),  # per-tap weights
            pl.BlockSpec((Cout, 1), lambda n: (0, 0)),            # effective bias
        ],
        out_specs=pl.BlockSpec((1, Cout, Lout), lambda n: (n, 0, 0)),
        compiler_params=pltpu.CompilerParams(
            dimension_semantics=("parallel",)),
        cost_estimate=cost,
    )(x_flat, w_taps, b_eff)

    # Strip padded-width columns + lane padding:
    # (N, Cout, Lout) -> (N, Cout, Hout, Wp) -> (N, Cout, Hout, Wout)
    out = out_flat[:, :, :Hout * Wp].reshape(N, Cout, Hout, Wp)[:, :, :, :Wout]
    return out


def reference_forward(x1_nchw, weight_oihw, bias, other, y, pad=3):
    conv = lax.conv_general_dilated(
        x1_nchw, weight_oihw, window_strides=(1, 1),
        padding=((pad, pad), (pad, pad)),
        dimension_numbers=("NCHW", "OIHW", "NCHW"))
    return y + (conv + bias.reshape(1, -1, 1, 1) + other)


if __name__ == "__main__":
    key = jax.random.PRNGKey(0)
    k_x, k_w, k_b = jax.random.split(key, 3)

    # Shapes from the module spec: x1 = torch.randn(1, 3, 64, 64), Conv2d(3, 8, 3, padding=3)
    N, Cin, H, W = 1, 3, 64, 64
    Cout, K = 8, 3

    x1 = jax.random.normal(k_x, (N, Cin, H, W), dtype=jnp.float32)
    fan_in = Cin * K * K
    bound = 1.0 / (fan_in ** 0.5)
    weight = jax.random.uniform(k_w, (Cout, Cin, K, K), jnp.float32, -bound, bound)
    bias = jax.random.uniform(k_b, (Cout,), jnp.float32, -bound, bound)

    other = 1.0
    y = 1.0

    out = jax.block_until_ready(model_forward(x1, weight, bias, other, y))
    ref = reference_forward(x1, weight, bias, other, y)

    assert out.shape == (N, Cout, H + 4, W + 4), out.shape
    assert jnp.allclose(out, ref, atol=1e-4, rtol=1e-4), float(jnp.max(jnp.abs(out - ref)))

    print("KERNEL_OK")
</pallas_src>

<mosaic_0001>
module attributes {stable_mosaic.version = 11 : i64} {
  func.func @conv_shift_dot_kernel(%arg0: i32, %arg1: memref<1x3x5120xf32, #tpu.memory_space<vmem>>, %arg2: memref<9x8x3xf32, #tpu.memory_space<vmem>>, %arg3: memref<8x1xf32, #tpu.memory_space<vmem>>, %arg4: memref<1x8x4864xf32, #tpu.memory_space<vmem>>) attributes {dimension_semantics = [#tpu.dimension_semantics<parallel>], iteration_bounds = array<i64: 1>, scalar_prefetch = 0 : i64, scratch_operands = 0 : i64, tpu.core_type = #tpu.core_type<tc>, window_params = [{transform_indices = @transform_0, window_bounds = array<i64: 1, 3, 5120>}, {pipeline_mode = #tpu.pipeline_mode<synchronous>, transform_indices = @transform_1, window_bounds = array<i64: 9, 8, 3>}, {pipeline_mode = #tpu.pipeline_mode<synchronous>, transform_indices = @transform_2, window_bounds = array<i64: 8, 1>}, {transform_indices = @transform_3, window_bounds = array<i64: 1, 8, 4864>}]} {
    %c0 = arith.constant 0 : index
    %c0_0 = arith.constant 0 : index
    %c0_1 = arith.constant 0 : index
    %0 = vector.load %arg1[%c0, %c0_0, %c0_1] : memref<1x3x5120xf32, #tpu.memory_space<vmem>>, vector<1x3x5120xf32>
    %1 = vector.shape_cast %0 : vector<1x3x5120xf32> to vector<3x5120xf32>
    %c0_2 = arith.constant 0 : index
    %c0_3 = arith.constant 0 : index
    %2 = vector.load %arg3[%c0_2, %c0_3] : memref<8x1xf32, #tpu.memory_space<vmem>>, vector<8x1xf32>
    %3 = vector.shape_cast %2 : vector<8x1xf32> to vector<8x1xf32>
    %4 = vector.broadcast %3 : vector<8x1xf32> to vector<8x4864xf32>
    %5 = vector.extract_strided_slice %1 {offsets = [0, 0], sizes = [3, 4864], strides = [1, 1]} : vector<3x5120xf32> to vector<3x4864xf32>
    %c0_4 = arith.constant 0 : index
    %c0_5 = arith.constant 0 : index
    %c0_6 = arith.constant 0 : index
    %6 = vector.load %arg2[%c0_4, %c0_5, %c0_6] : memref<9x8x3xf32, #tpu.memory_space<vmem>>, vector<1x8x3xf32>
    %7 = vector.shape_cast %6 : vector<1x8x3xf32> to vector<8x3xf32>
    %cst = arith.constant dense<0.000000e+00> : vector<8x4864xf32>
    %8 = tpu.matmul %7, %5, %cst {dimension_numbers = #tpu.dot_dimension_numbers<[1], [0], [0], [1], [0, 0, 1, 1], [], []>} : vector<8x3xf32>, vector<3x4864xf32>, vector<8x4864xf32> -> vector<8x4864xf32>
    %9 = arith.addf %4, %8 : vector<8x4864xf32>
    %10 = vector.extract_strided_slice %1 {offsets = [0, 1], sizes = [3, 4864], strides = [1, 1]} : vector<3x5120xf32> to vector<3x4864xf32>
    %c1 = arith.constant 1 : index
    %c0_7 = arith.constant 0 : index
    %c0_8 = arith.constant 0 : index
    %11 = vector.load %arg2[%c1, %c0_7, %c0_8] : memref<9x8x3xf32, #tpu.memory_space<vmem>>, vector<1x8x3xf32>
    %12 = vector.shape_cast %11 : vector<1x8x3xf32> to vector<8x3xf32>
    %cst_9 = arith.constant dense<0.000000e+00> : vector<8x4864xf32>
    %13 = tpu.matmul %12, %10, %cst_9 {dimension_numbers = #tpu.dot_dimension_numbers<[1], [0], [0], [1], [0, 0, 1, 1], [], []>} : vector<8x3xf32>, vector<3x4864xf32>, vector<8x4864xf32> -> vector<8x4864xf32>
    %14 = arith.addf %9, %13 : vector<8x4864xf32>
    %15 = vector.extract_strided_slice %1 {offsets = [0, 2], sizes = [3, 4864], strides = [1, 1]} : vector<3x5120xf32> to vector<3x4864xf32>
    %c2 = arith.constant 2 : index
    %c0_10 = arith.constant 0 : index
    %c0_11 = arith.constant 0 : index
    %16 = vector.load %arg2[%c2, %c0_10, %c0_11] : memref<9x8x3xf32, #tpu.memory_space<vmem>>, vector<1x8x3xf32>
    %17 = vector.shape_cast %16 : vector<1x8x3xf32> to vector<8x3xf32>
    %cst_12 = arith.constant dense<0.000000e+00> : vector<8x4864xf32>
    %18 = tpu.matmul %17, %15, %cst_12 {dimension_numbers = #tpu.dot_dimension_numbers<[1], [0], [0], [1], [0, 0, 1, 1], [], []>} : vector<8x3xf32>, vector<3x4864xf32>, vector<8x4864xf32> -> vector<8x4864xf32>
    %19 = arith.addf %14, %18 : vector<8x4864xf32>
    %20 = vector.extract_strided_slice %1 {offsets = [0, 70], sizes = [3, 4864], strides = [1, 1]} : vector<3x5120xf32> to vector<3x4864xf32>
    %c3 = arith.constant 3 : index
    %c0_13 = arith.constant 0 : index
    %c0_14 = arith.constant 0 : index
    %21 = vector.load %arg2[%c3, %c0_13, %c0_14] : memref<9x8x3xf32, #tpu.memory_space<vmem>>, vector<1x8x3xf32>
    %22 = vector.shape_cast %21 : vector<1x8x3xf32> to vector<8x3xf32>
    %cst_15 = arith.constant dense<0.000000e+00> : vector<8x4864xf32>
    %23 = tpu.matmul %22, %20, %cst_15 {dimension_numbers = #tpu.dot_dimension_numbers<[1], [0], [0], [1], [0, 0, 1, 1], [], []>} : vector<8x3xf32>, vector<3x4864xf32>, vector<8x4864xf32> -> vector<8x4864xf32>
    %24 = arith.addf %19, %23 : vector<8x4864xf32>
    %25 = vector.extract_strided_slice %1 {offsets = [0, 71], sizes = [3, 4864], strides = [1, 1]} : vector<3x5120xf32> to vector<3x4864xf32>
    %c4 = arith.constant 4 : index
    %c0_16 = arith.constant 0 : index
    %c0_17 = arith.constant 0 : index
    %26 = vector.load %arg2[%c4, %c0_16, %c0_17] : memref<9x8x3xf32, #tpu.memory_space<vmem>>, vector<1x8x3xf32>
    %27 = vector.shape_cast %26 : vector<1x8x3xf32> to vector<8x3xf32>
    %cst_18 = arith.constant dense<0.000000e+00> : vector<8x4864xf32>
    %28 = tpu.matmul %27, %25, %cst_18 {dimension_numbers = #tpu.dot_dimension_numbers<[1], [0], [0], [1], [0, 0, 1, 1], [], []>} : vector<8x3xf32>, vector<3x4864xf32>, vector<8x4864xf32> -> vector<8x4864xf32>
    %29 = arith.addf %24, %28 : vector<8x4864xf32>
    %30 = vector.extract_strided_slice %1 {offsets = [0, 72], sizes = [3, 4864], strides = [1, 1]} : vector<3x5120xf32> to vector<3x4864xf32>
    %c5 = arith.constant 5 : index
    %c0_19 = arith.constant 0 : index
    %c0_20 = arith.constant 0 : index
    %31 = vector.load %arg2[%c5, %c0_19, %c0_20] : memref<9x8x3xf32, #tpu.memory_space<vmem>>, vector<1x8x3xf32>
    %32 = vector.shape_cast %31 : vector<1x8x3xf32> to vector<8x3xf32>
    %cst_21 = arith.constant dense<0.000000e+00> : vector<8x4864xf32>
    %33 = tpu.matmul %32, %30, %cst_21 {dimension_numbers = #tpu.dot_dimension_numbers<[1], [0], [0], [1], [0, 0, 1, 1], [], []>} : vector<8x3xf32>, vector<3x4864xf32>, vector<8x4864xf32> -> vector<8x4864xf32>
    %34 = arith.addf %29, %33 : vector<8x4864xf32>
    %35 = vector.extract_strided_slice %1 {offsets = [0, 140], sizes = [3, 4864], strides = [1, 1]} : vector<3x5120xf32> to vector<3x4864xf32>
    %c6 = arith.constant 6 : index
    %c0_22 = arith.constant 0 : index
    %c0_23 = arith.constant 0 : index
    %36 = vector.load %arg2[%c6, %c0_22, %c0_23] : memref<9x8x3xf32, #tpu.memory_space<vmem>>, vector<1x8x3xf32>
    %37 = vector.shape_cast %36 : vector<1x8x3xf32> to vector<8x3xf32>
    %cst_24 = arith.constant dense<0.000000e+00> : vector<8x4864xf32>
    %38 = tpu.matmul %37, %35, %cst_24 {dimension_numbers = #tpu.dot_dimension_numbers<[1], [0], [0], [1], [0, 0, 1, 1], [], []>} : vector<8x3xf32>, vector<3x4864xf32>, vector<8x4864xf32> -> vector<8x4864xf32>
    %39 = arith.addf %34, %38 : vector<8x4864xf32>
    %40 = vector.extract_strided_slice %1 {offsets = [0, 141], sizes = [3, 4864], strides = [1, 1]} : vector<3x5120xf32> to vector<3x4864xf32>
    %c7 = arith.constant 7 : index
    %c0_25 = arith.constant 0 : index
    %c0_26 = arith.constant 0 : index
    %41 = vector.load %arg2[%c7, %c0_25, %c0_26] : memref<9x8x3xf32, #tpu.memory_space<vmem>>, vector<1x8x3xf32>
    %42 = vector.shape_cast %41 : vector<1x8x3xf32> to vector<8x3xf32>
    %cst_27 = arith.constant dense<0.000000e+00> : vector<8x4864xf32>
    %43 = tpu.matmul %42, %40, %cst_27 {dimension_numbers = #tpu.dot_dimension_numbers<[1], [0], [0], [1], [0, 0, 1, 1], [], []>} : vector<8x3xf32>, vector<3x4864xf32>, vector<8x4864xf32> -> vector<8x4864xf32>
    %44 = arith.addf %39, %43 : vector<8x4864xf32>
    %45 = vector.extract_strided_slice %1 {offsets = [0, 142], sizes = [3, 4864], strides = [1, 1]} : vector<3x5120xf32> to vector<3x4864xf32>
    %c8 = arith.constant 8 : index
    %c0_28 = arith.constant 0 : index
    %c0_29 = arith.constant 0 : index
    %46 = vector.load %arg2[%c8, %c0_28, %c0_29] : memref<9x8x3xf32, #tpu.memory_space<vmem>>, vector<1x8x3xf32>
    %47 = vector.shape_cast %46 : vector<1x8x3xf32> to vector<8x3xf32>
    %cst_30 = arith.constant dense<0.000000e+00> : vector<8x4864xf32>
    %48 = tpu.matmul %47, %45, %cst_30 {dimension_numbers = #tpu.dot_dimension_numbers<[1], [0], [0], [1], [0, 0, 1, 1], [], []>} : vector<8x3xf32>, vector<3x4864xf32>, vector<8x4864xf32> -> vector<8x4864xf32>
    %49 = arith.addf %44, %48 : vector<8x4864xf32>
    %c0_31 = arith.constant 0 : index
    %c0_32 = arith.constant 0 : index
    %c0_33 = arith.constant 0 : index
    %50 = vector.load %arg4[%c0_31, %c0_32, %c0_33] : memref<1x8x4864xf32, #tpu.memory_space<vmem>>, vector<1x8x4864xf32>
    %51 = vector.shape_cast %50 : vector<1x8x4864xf32> to vector<8x4864xf32>
    %52 = vector.shape_cast %49 : vector<8x4864xf32> to vector<1x8x4864xf32>
    tpu.vector_store %arg4[%c0_31, %c0_32, %c0_33], %52 {strides = array<i32>} : memref<1x8x4864xf32, #tpu.memory_space<vmem>>, vector<1x8x4864xf32>,
    return
  }
  func.func @transform_0(%arg0: i32) -> (i32, i32, i32) {
    %c0_i32 = arith.constant 0 : i32
    %c0_i32_0 = arith.constant 0 : i32
    %c0_i32_1 = arith.constant 0 : i32
    return %arg0, %c0_i32, %c0_i32_0 : i32, i32, i32
  }
  func.func @transform_1(%arg0: i32) -> (i32, i32, i32) {
    %c0_i32 = arith.constant 0 : i32
    %c0_i32_0 = arith.constant 0 : i32
    %c0_i32_1 = arith.constant 0 : i32
    %c0_i32_2 = arith.constant 0 : i32
    return %c0_i32, %c0_i32_0, %c0_i32_1 : i32, i32, i32
  }
  func.func @transform_2(%arg0: i32) -> (i32, i32) {
    %c0_i32 = arith.constant 0 : i32
    %c0_i32_0 = arith.constant 0 : i32
    %c0_i32_1 = arith.constant 0 : i32
    return %c0_i32, %c0_i32_0 : i32, i32
  }
  func.func @transform_3(%arg0: i32) -> (i32, i32, i32) {
    %c0_i32 = arith.constant 0 : i32
    %c0_i32_0 = arith.constant 0 : i32
    %c0_i32_1 = arith.constant 0 : i32
    return %arg0, %c0_i32, %c0_i32_0 : i32, i32, i32
  }
}

</mosaic_0001>

<llo_original>
// kernel: model_forward.1
$region0: #{model_forward.1}
  #allocation0 [shape = 'u32[]', space=smem, size = 0x4, offset = 0x4, fixed_abs, tag = 'smem constant byte address 0x4 - core index']
  #allocation1 [shape = 'u32[144,128]{1,0:T(1,128)}', space=vmem, size = 0x12000, scoped, tag = 'internal scratch']
  %s0 = inlined_call_operand.vmem [shape: f32[1,3,5120], index: 0, kind: input, shape index: {}]
  %s1 = inlined_call_operand.vmem [shape: f32[9,8,3], index: 1, kind: input, shape index: {}]
  %s2 = inlined_call_operand.vmem [shape: f32[8,1], index: 2, kind: input, shape index: {}]
  %s3 = inlined_call_operand.vmem [shape: f32[1,8,4864], index: 3, kind: output, shape index: {}]
  %s4 = sld [smem:[#allocation0]]
  $region22: #{model_forward.1} parent=0
    _
  %s6 = ssub.s32 1, %s4
  %s7 = scalar_select 0, %s6, %s4
  // Predicated region
  $region2: #{model_forward.1} parent=0 // pred_check
    _
  $region3: #{model_forward.1} parent=0 // pred_check_branch
    %9 = sbr.rel (0) target = $region5
  $region4: #{model_forward.1} parent=0 // pred_region
    _
  $region5: #{model_forward.1} parent=0 // pred_fallthru
    _
  // Predicated region
  $region6: #{model_forward.1} parent=0 // pred_check
    _
  $region7: #{model_forward.1} parent=0 // pred_check_branch
    %11 = sbr.rel (0) target = $region9
  $region8: #{model_forward.1} parent=0 // pred_region
    _
  $region9: #{model_forward.1} parent=0 // pred_fallthru
    _
  // Predicated region
  $region10: #{model_forward.1} parent=0 // pred_check
    _
  $region11: #{model_forward.1} parent=0 // pred_check_branch
    %13 = sbr.rel (0) target = $region13
  $region12: #{model_forward.1} parent=0 // pred_region
    _
  $region13: #{model_forward.1} parent=0 // pred_fallthru
    _
  %v14 = vld [vmem:[%s0] sm:$0x77]
  %v15 = vld [vmem:[%s0 + $0x8] sm:$0x77]
  %v16 = vld [vmem:[%s0 + $0x10] sm:$0x77]
  %v17 = vld [vmem:[%s0 + $0x18] sm:$0x77]
  %v18 = vld [vmem:[%s0 + $0x20] sm:$0x77]
  %v19 = vld [vmem:[%s0 + $0x28] sm:$0x77]
  %v20 = vld [vmem:[%s0 + $0x30] sm:$0x77]
  %v21 = vld [vmem:[%s0 + $0x38] sm:$0x77]
  %v22 = vld [vmem:[%s0 + $0x40] sm:$0x77]
  %v23 = vld [vmem:[%s0 + $0x48] sm:$0x77]
  %v24 = vld [vmem:[%s0 + $0x50] sm:$0x77]
  %v25 = vld [vmem:[%s0 + $0x58] sm:$0x77]
  %v26 = vld [vmem:[%s0 + $0x60] sm:$0x77]
  %v27 = vld [vmem:[%s0 + $0x68] sm:$0x77]
  %v28 = vld [vmem:[%s0 + $0x70] sm:$0x77]
  %v29 = vld [vmem:[%s0 + $0x78] sm:$0x77]
  %v30 = vld [vmem:[%s0 + $0x80] sm:$0x77]
  %v31 = vld [vmem:[%s0 + $0x88] sm:$0x77]
  %v32 = vld [vmem:[%s0 + $0x90] sm:$0x77]
  %v33 = vld [vmem:[%s0 + $0x98] sm:$0x77]
  %v34 = vld [vmem:[%s2] sm:$0xff]
  %36 = vset.pattern.permute.xlu0 0
  %37 = vperm.xlu0 %36, %v34
  %v38 = vpop.permute.xlu0 %37
  %v40 = vld [vmem:[%s1] sm:$0xff]
  %v60 = vcombine.high %v14, %v14
  %v61 = vcombine.high %v15, %v15
  %v62 = vcombine.high %v16, %v16
  %v63 = vcombine.high %v17, %v17
  %v64 = vcombine.high %v18, %v18
  %v65 = vcombine.high %v19, %v19
  %v66 = vcombine.high %v20, %v20
  %v67 = vcombine.high %v21, %v21
  %v68 = vcombine.high %v22, %v22
  %v69 = vcombine.high %v23, %v23
  %v70 = vcombine.high %v24, %v24
  %v71 = vcombine.high %v25, %v25
  %v72 = vcombine.high %v26, %v26
  %v73 = vcombine.high %v27, %v27
  %v74 = vcombine.high %v28, %v28
  %v75 = vcombine.high %v29, %v29
  %v76 = vcombine.high %v30, %v30
  %v77 = vcombine.high %v31, %v31
  %v78 = vcombine.high %v32, %v32
  %vm79 = vcmask 23552
  %v81 = vsel %vm79, %v40, 0
  %vm83 = vcmask 1042432
  %v84 = vsel %vm83, %v14, 0
  %v86 = vsel %vm83, %v60, 0
  %v88 = vsel %vm83, %v15, 0
  %v90 = vsel %vm83, %v61, 0
  %v92 = vsel %vm83, %v16, 0
  %v94 = vsel %vm83, %v62, 0
  %v96 = vsel %vm83, %v17, 0
  %v98 = vsel %vm83, %v63, 0
  %v100 = vsel %vm83, %v18, 0
  %v102 = vsel %vm83, %v64, 0
  %v104 = vsel %vm83, %v19, 0
  %v106 = vsel %vm83, %v65, 0
  %v108 = vsel %vm83, %v20, 0
  %v110 = vsel %vm83, %v66, 0
  %v112 = vsel %vm83, %v21, 0
  %v114 = vsel %vm83, %v67, 0
  %v116 = vsel %vm83, %v22, 0
  %v118 = vsel %vm83, %v68, 0
  %v120 = vsel %vm83, %v23, 0
  %v122 = vsel %vm83, %v69, 0
  %v124 = vsel %vm83, %v24, 0
  %v126 = vsel %vm83, %v70, 0
  %v128 = vsel %vm83, %v25, 0
  %v130 = vsel %vm83, %v71, 0
  %v132 = vsel %vm83, %v26, 0
  %v134 = vsel %vm83, %v72, 0
  %v136 = vsel %vm83, %v27, 0
  %v138 = vsel %vm83, %v73, 0
  %v140 = vsel %vm83, %v28, 0
  %v142 = vsel %vm83, %v74, 0
  %v144 = vsel %vm83, %v29, 0
  %v146 = vsel %vm83, %v75, 0
  %v148 = vsel %vm83, %v30, 0
  %v150 = vsel %vm83, %v76, 0
  %v152 = vsel %vm83, %v31, 0
  %v154 = vsel %vm83, %v77, 0
  %v156 = vsel %vm83, %v32, 0
  %v158 = vsel %vm83, %v78, 0
  %160 = vmatprep.subr.mxu0 %v86
  %161 = vmatpush1.msra.mxu0 %v84
  %162 = vmatprep.subr.mxu0 0.0
  %163 = vmatpush1.msra.mxu0 0.0
  %164 = vmatprep.subr.mxu0 0.0
  %165 = vmatpush1.msra.mxu0 0.0
  %166 = vmatprep.subr.mxu0 0.0
  %167 = vmatpush1.msra.mxu0 0.0
  %168 = vmatprep.subr.mxu0 0.0
  %169 = vmatpush1.msra.mxu0 0.0
  %170 = vmatprep.subr.mxu0 0.0
  %171 = vmatpush1.msra.mxu0 0.0
  %172 = vmatprep.subr.mxu0 0.0
  %173 = vmatpush1.msra.mxu0 0.0
  %174 = vmatprep.subr.mxu0 0.0
  %175 = vmatpush1.msra.mxu0 0.0
  %176 = vmatprep.subr.mxu0 0.0
  %177 = vmatpush1.msra.mxu0 0.0
  %178 = vmatprep.subr.mxu0 0.0
  %179 = vmatpush1.msra.mxu0 0.0
  %180 = vmatprep.subr.mxu0 0.0
  %181 = vmatpush1.msra.mxu0 0.0
  %182 = vmatprep.subr.mxu0 0.0
  %183 = vmatpush1.msra.mxu0 0.0
  %184 = vmatprep.subr.mxu0 0.0
  %185 = vmatpush1.msra.mxu0 0.0
  %186 = vmatprep.subr.mxu0 0.0
  %187 = vmatpush1.msra.mxu0 0.0
  %188 = vmatprep.subr.mxu0 0.0
  %189 = vmatpush1.msra.mxu0 0.0
  %190 = vmatprep.subr.mxu0 0.0
  %191 = vmatpush1.msra.mxu0 0.0
  %192 = vmatprep.subr.mxu0 0.0
  %193 = vmatpush1.msra.mxu0 0.0
  %194 = vmatprep.subr.mxu0 0.0
  %195 = vmatpush1.msra.mxu0 0.0
  %196 = vmatprep.subr.mxu0 0.0
  %197 = vmatpush1.msra.mxu0 0.0
  %198 = vmatprep.subr.mxu0 0.0
  %199 = vmatpush1.msra.mxu0 0.0
  %200 = vmatprep.subr.mxu0 0.0
  %201 = vmatpush1.msra.mxu0 0.0
  %202 = vmatprep.subr.mxu0 0.0
  %203 = vmatpush1.msra.mxu0 0.0
  %204 = vmatprep.subr.mxu0 0.0
  %205 = vmatpush1.msra.mxu0 0.0
  %206 = vmatprep.subr.mxu0 0.0
  %207 = vmatpush1.msra.mxu0 0.0
  %208 = vmatprep.subr.mxu0 0.0
  %209 = vmatpush1.msra.mxu0 0.0
  %210 = vmatprep.subr.mxu0 0.0
  %211 = vmatpush1.msra.mxu0 0.0
  %212 = vmatprep.subr.mxu0 0.0
  %213 = vmatpush1.msra.mxu0 0.0
  %214 = vmatprep.subr.mxu0 0.0
  %215 = vmatpush1.msra.mxu0 0.0
  %216 = vmatprep.subr.mxu0 0.0
  %217 = vmatpush1.msra.mxu0 0.0
  %218 = vmatprep.subr.mxu0 0.0
  %219 = vmatpush1.msra.mxu0 0.0
  %220 = vmatprep.subr.mxu0 0.0
  %221 = vmatpush1.msra.mxu0 0.0
  %222 = vmatprep.subr.mxu0 0.0
  %223 = vmatpush1.msra.mxu0 0.0
  %224 = vmatprep.mubr.f32.mxu0 0.0
  %225 = vmatmul.mubr.f32.gmra.mrb[0].mxu0 %v81
  %v226 = vpop.f32.mrb[0].mxu0
  %v227 = vadd.f32 0.0, %v226
  %v228 = vpop.f32.mrb[0].mxu0
  %v229 = vadd.f32 0.0, %v228
  %230 = vdwg.mxu0
  %231 = vmatprep.subr.mxu0 %v90
  %232 = vmatpush1.msra.mxu0 %v88
  %233 = vmatprep.subr.mxu0 0.0
  %234 = vmatpush1.msra.mxu0 0.0
  %235 = vmatprep.subr.mxu0 0.0
  %236 = vmatpush1.msra.mxu0 0.0
  %237 = vmatprep.subr.mxu0 0.0
  %238 = vmatpush1.msra.mxu0 0.0
  %239 = vmatprep.subr.mxu0 0.0
  %240 = vmatpush1.msra.mxu0 0.0
  %241 = vmatprep.subr.mxu0 0.0
  %242 = vmatpush1.msra.mxu0 0.0
  %243 = vmatprep.subr.mxu0 0.0
  %244 = vmatpush1.msra.mxu0 0.0
  %245 = vmatprep.subr.mxu0 0.0
  %246 = vmatpush1.msra.mxu0 0.0
  %247 = vmatprep.subr.mxu0 0.0
  %248 = vmatpush1.msra.mxu0 0.0
  %249 = vmatprep.subr.mxu0 0.0
  %250 = vmatpush1.msra.mxu0 0.0
  %251 = vmatprep.subr.mxu0 0.0
  %252 = vmatpush1.msra.mxu0 0.0
  %253 = vmatprep.subr.mxu0 0.0
  %254 = vmatpush1.msra.mxu0 0.0
  %255 = vmatprep.subr.mxu0 0.0
  %256 = vmatpush1.msra.mxu0 0.0
  %257 = vmatprep.subr.mxu0 0.0
  %258 = vmatpush1.msra.mxu0 0.0
  %259 = vmatprep.subr.mxu0 0.0
  %260 = vmatpush1.msra.mxu0 0.0
  %261 = vmatprep.subr.mxu0 0.0
  %262 = vmatpush1.msra.mxu0 0.0
  %263 = vmatprep.subr.mxu0 0.0
  %264 = vmatpush1.msra.mxu0 0.0
  %265 = vmatprep.subr.mxu0 0.0
  %266 = vmatpush1.msra.mxu0 0.0
  %267 = vmatprep.subr.mxu0 0.0
  %268 = vmatpush1.msra.mxu0 0.0
  %269 = vmatprep.subr.mxu0 0.0
  %270 = vmatpush1.msra.mxu0 0.0
  %271 = vmatprep.subr.mxu0 0.0
  %272 = vmatpush1.msra.mxu0 0.0
  %273 = vmatprep.subr.mxu0 0.0
  %274 = vmatpush1.msra.mxu0 0.0
  %275 = vmatprep.subr.mxu0 0.0
  %276 = vmatpush1.msra.mxu0 0.0
  %277 = vmatprep.subr.mxu0 0.0
  %278 = vmatpush1.msra.mxu0 0.0
  %279 = vmatprep.subr.mxu0 0.0
  %280 = vmatpush1.msra.mxu0 0.0
  %281 = vmatprep.subr.mxu0 0.0
  %282 = vmatpush1.msra.mxu0 0.0
  %283 = vmatprep.subr.mxu0 0.0
  %284 = vmatpush1.msra.mxu0 0.0
  %285 = vmatprep.subr.mxu0 0.0
  %286 = vmatpush1.msra.mxu0 0.0
  %287 = vmatprep.subr.mxu0 0.0
  %288 = vmatpush1.msra.mxu0 0.0
  %289 = vmatprep.subr.mxu0 0.0
  %290 = vmatpush1.msra.mxu0 0.0
  %291 = vmatprep.subr.mxu0 0.0
  %292 = vmatpush1.msra.mxu0 0.0
  %293 = vmatprep.subr.mxu0 0.0
  %294 = vmatpush1.msra.mxu0 0.0
  %295 = vmatprep.mubr.f32.mxu0 0.0
  %296 = vmatmul.mubr.f32.gmra.mrb[0].mxu0 %v81
  %v297 = vpop.f32.mrb[0].mxu0
  %v298 = vadd.f32 0.0, %v297
  %v299 = vpop.f32.mrb[0].mxu0
  %v300 = vadd.f32 0.0, %v299
  %301 = vdwg.mxu0
  %302 = vmatprep.subr.mxu0 %v94
  %303 = vmatpush1.msra.mxu0 %v92
  %304 = vmatprep.subr.mxu0 0.0
  %305 = vmatpush1.msra.mxu0 0.0
  %306 = vmatprep.subr.mxu0 0.0
  %307 = vmatpush1.msra.mxu0 0.0
  %308 = vmatprep.subr.mxu0 0.0
  %309 = vmatpush1.msra.mxu0 0.0
  %310 = vmatprep.subr.mxu0 0.0
  %311 = vmatpush1.msra.mxu0 0.0
  %312 = vmatprep.subr.mxu0 0.0
  %313 = vmatpush1.msra.mxu0 0.0
  %314 = vmatprep.subr.mxu0 0.0
  %315 = vmatpush1.msra.mxu0 0.0
  %316 = vmatprep.subr.mxu0 0.0
  %317 = vmatpush1.msra.mxu0 0.0
  %318 = vmatprep.subr.mxu0 0.0
  %319 = vmatpush1.msra.mxu0 0.0
  %320 = vmatprep.subr.mxu0 0.0
  %321 = vmatpush1.msra.mxu0 0.0
  %322 = vmatprep.subr.mxu0 0.0
  %323 = vmatpush1.msra.mxu0 0.0
  %324 = vmatprep.subr.mxu0 0.0
  %325 = vmatpush1.msra.mxu0 0.0
  %326 = vmatprep.subr.mxu0 0.0
  %327 = vmatpush1.msra.mxu0 0.0
  %328 = vmatprep.subr.mxu0 0.0
  %329 = vmatpush1.msra.mxu0 0.0
  %330 = vmatprep.subr.mxu0 0.0
  %331 = vmatpush1.msra.mxu0 0.0
  %332 = vmatprep.subr.mxu0 0.0
  %333 = vmatpush1.msra.mxu0 0.0
  %334 = vmatprep.subr.mxu0 0.0
  %335 = vmatpush1.msra.mxu0 0.0
  %336 = vmatprep.subr.mxu0 0.0
  %337 = vmatpush1.msra.mxu0 0.0
  %338 = vmatprep.subr.mxu0 0.0
  %339 = vmatpush1.msra.mxu0 0.0
  %340 = vmatprep.subr.mxu0 0.0
  %341 = vmatpush1.msra.mxu0 0.0
  %342 = vmatprep.subr.mxu0 0.0
  %343 = vmatpush1.msra.mxu0 0.0
  %344 = vmatprep.subr.mxu0 0.0
  %345 = vmatpush1.msra.mxu0 0.0
  %346 = vmatprep.subr.mxu0 0.0
  %347 = vmatpush1.msra.mxu0 0.0
  %348 = vmatprep.subr.mxu0 0.0
  %349 = vmatpush1.msra.mxu0 0.0
  %350 = vmatprep.subr.mxu0 0.0
  %351 = vmatpush1.msra.mxu0 0.0
  %352 = vmatprep.subr.mxu0 0.0
  %353 = vmatpush1.msra.mxu0 0.0
  %354 = vmatprep.subr.mxu0 0.0
  %355 = vmatpush1.msra.mxu0 0.0
  %356 = vmatprep.subr.mxu0 0.0
  %357 = vmatpush1.msra.mxu0 0.0
  %358 = vmatprep.subr.mxu0 0.0
  %359 = vmatpush1.msra.mxu0 0.0
  %360 = vmatprep.subr.mxu0 0.0
  %361 = vmatpush1.msra.mxu0 0.0
  %362 = vmatprep.subr.mxu0 0.0
  %363 = vmatpush1.msra.mxu0 0.0
  %364 = vmatprep.subr.mxu0 0.0
  %365 = vmatpush1.msra.mxu0 0.0
  %366 = vmatprep.mubr.f32.mxu0 0.0
  %367 = vmatmul.mubr.f32.gmra.mrb[0].mxu0 %v81
  %v368 = vpop.f32.mrb[0].mxu0
  %v369 = vadd.f32 0.0, %v368
  %v370 = vpop.f32.mrb[0].mxu0
  %v371 = vadd.f32 0.0, %v370
  %372 = vdwg.mxu0
  %373 = vmatprep.subr.mxu0 %v98
  %374 = vmatpush1.msra.mxu0 %v96
  %375 = vmatprep.subr.mxu0 0.0
  %376 = vmatpush1.msra.mxu0 0.0
  %377 = vmatprep.subr.mxu0 0.0
  %378 = vmatpush1.msra.mxu0 0.0
  %379 = vmatprep.subr.mxu0 0.0
  %380 = vmatpush1.msra.mxu0 0.0
  %381 = vmatprep.subr.mxu0 0.0
  %382 = vmatpush1.msra.mxu0 0.0
  %383 = vmatprep.subr.mxu0 0.0
  %384 = vmatpush1.msra.mxu0 0.0
  %385 = vmatprep.subr.mxu0 0.0
  %386 = vmatpush1.msra.mxu0 0.0
  %387 = vmatprep.subr.mxu0 0.0
  %388 = vmatpush1.msra.mxu0 0.0
  %389 = vmatprep.subr.mxu0 0.0
  %390 = vmatpush1.msra.mxu0 0.0
  %391 = vmatprep.subr.mxu0 0.0
  %392 = vmatpush1.msra.mxu0 0.0
  %393 = vmatprep.subr.mxu0 0.0
  %394 = vmatpush1.msra.mxu0 0.0
  %395 = vmatprep.subr.mxu0 0.0
  %396 = vmatpush1.msra.mxu0 0.0
  %397 = vmatprep.subr.mxu0 0.0
  %398 = vmatpush1.msra.mxu0 0.0
  %399 = vmatprep.subr.mxu0 0.0
  %400 = vmatpush1.msra.mxu0 0.0
  %401 = vmatprep.subr.mxu0 0.0
  %402 = vmatpush1.msra.mxu0 0.0
  %403 = vmatprep.subr.mxu0 0.0
  %404 = vmatpush1.msra.mxu0 0.0
  %405 = vmatprep.subr.mxu0 0.0
  %406 = vmatpush1.msra.mxu0 0.0
  %407 = vmatprep.subr.mxu0 0.0
  %408 = vmatpush1.msra.mxu0 0.0
  %409 = vmatprep.subr.mxu0 0.0
  %410 = vmatpush1.msra.mxu0 0.0
  %411 = vmatprep.subr.mxu0 0.0
  %412 = vmatpush1.msra.mxu0 0.0
  %413 = vmatprep.subr.mxu0 0.0
  %414 = vmatpush1.msra.mxu0 0.0
  %415 = vmatprep.subr.mxu0 0.0
  %416 = vmatpush1.msra.mxu0 0.0
  %417 = vmatprep.subr.mxu0 0.0
  %418 = vmatpush1.msra.mxu0 0.0
  %419 = vmatprep.subr.mxu0 0.0
  %420 = vmatpush1.msra.mxu0 0.0
  %421 = vmatprep.subr.mxu0 0.0
  %422 = vmatpush1.msra.mxu0 0.0
  %423 = vmatprep.subr.mxu0 0.0
  %424 = vmatpush1.msra.mxu0 0.0
  %425 = vmatprep.subr.mxu0 0.0
  %426 = vmatpush1.msra.mxu0 0.0
  %427 = vmatprep.subr.mxu0 0.0
  %428 = vmatpush1.msra.mxu0 0.0
  %429 = vmatprep.subr.mxu0 0.0
  %430 = vmatpush1.msra.mxu0 0.0
  %431 = vmatprep.subr.mxu0 0.0
  %432 = vmatpush1.msra.mxu0 0.0
  %433 = vmatprep.subr.mxu0 0.0
  %434 = vmatpush1.msra.mxu0 0.0
  %435 = vmatprep.subr.mxu0 0.0
  %436 = vmatpush1.msra.mxu0 0.0
  %437 = vmatprep.mubr.f32.mxu0 0.0
  %438 = vmatmul.mubr.f32.gmra.mrb[0].mxu0 %v81
  %v439 = vpop.f32.mrb[0].mxu0
  %v440 = vadd.f32 0.0, %v439
  %v441 = vpop.f32.mrb[0].mxu0
  %v442 = vadd.f32 0.0, %v441
  %443 = vdwg.mxu0
  %444 = vmatprep.subr.mxu0 %v102
  %445 = vmatpush1.msra.mxu0 %v100
  %446 = vmatprep.subr.mxu0 0.0
  %447 = vmatpush1.msra.mxu0 0.0
  %448 = vmatprep.subr.mxu0 0.0
  %449 = vmatpush1.msra.mxu0 0.0
  %450 = vmatprep.subr.mxu0 0.0
  %451 = vmatpush1.msra.mxu0 0.0
  %452 = vmatprep.subr.mxu0 0.0
  %453 = vmatpush1.msra.mxu0 0.0
  %454 = vmatprep.subr.mxu0 0.0
  %455 = vmatpush1.msra.mxu0 0.0
  %456 = vmatprep.subr.mxu0 0.0
  %457 = vmatpush1.msra.mxu0 0.0
  %458 = vmatprep.subr.mxu0 0.0
  %459 = vmatpush1.msra.mxu0 0.0
  %460 = vmatprep.subr.mxu0 0.0
  %461 = vmatpush1.msra.mxu0 0.0
  %462 = vmatprep.subr.mxu0 0.0
  %463 = vmatpush1.msra.mxu0 0.0
  %464 = vmatprep.subr.mxu0 0.0
  %465 = vmatpush1.msra.mxu0 0.0
  %466 = vmatprep.subr.mxu0 0.0
  %467 = vmatpush1.msra.mxu0 0.0
  %468 = vmatprep.subr.mxu0 0.0
  %469 = vmatpush1.msra.mxu0 0.0
  %470 = vmatprep.subr.mxu0 0.0
  %471 = vmatpush1.msra.mxu0 0.0
  %472 = vmatprep.subr.mxu0 0.0
  %473 = vmatpush1.msra.mxu0 0.0
  %474 = vmatprep.subr.mxu0 0.0
  %475 = vmatpush1.msra.mxu0 0.0
  %476 = vmatprep.subr.mxu0 0.0
  %477 = vmatpush1.msra.mxu0 0.0
  %478 = vmatprep.subr.mxu0 0.0
  %479 = vmatpush1.msra.mxu0 0.0
  %480 = vmatprep.subr.mxu0 0.0
  %481 = vmatpush1.msra.mxu0 0.0
  %482 = vmatprep.subr.mxu0 0.0
  %483 = vmatpush1.msra.mxu0 0.0
  %484 = vmatprep.subr.mxu0 0.0
  %485 = vmatpush1.msra.mxu0 0.0
  %486 = vmatprep.subr.mxu0 0.0
  %487 = vmatpush1.msra.mxu0 0.0
  %488 = vmatprep.subr.mxu0 0.0
  %489 = vmatpush1.msra.mxu0 0.0
  %490 = vmatprep.subr.mxu0 0.0
  %491 = vmatpush1.msra.mxu0 0.0
  %492 = vmatprep.subr.mxu0 0.0
  %493 = vmatpush1.msra.mxu0 0.0
  %494 = vmatprep.subr.mxu0 0.0
  %495 = vmatpush1.msra.mxu0 0.0
  %496 = vmatprep.subr.mxu0 0.0
  %497 = vmatpush1.msra.mxu0 0.0
  %498 = vmatprep.subr.mxu0 0.0
  %499 = vmatpush1.msra.mxu0 0.0
  %500 = vmatprep.subr.mxu0 0.0
  %501 = vmatpush1.msra.mxu0 0.0
  %502 = vmatprep.subr.mxu0 0.0
  %503 = vmatpush1.msra.mxu0 0.0
  %504 = vmatprep.subr.mxu0 0.0
  %505 = vmatpush1.msra.mxu0 0.0
  %506 = vmatprep.subr.mxu0 0.0
  %507 = vmatpush1.msra.mxu0 0.0
  %508 = vmatprep.mubr.f32.mxu0 0.0
  %509 = vmatmul.mubr.f32.gmra.mrb[0].mxu0 %v81
  %v510 = vpop.f32.mrb[0].mxu0
  %v511 = vadd.f32 0.0, %v510
  %v512 = vpop.f32.mrb[0].mxu0
  %v513 = vadd.f32 0.0, %v512
  %514 = vdwg.mxu0
  %515 = vmatprep.subr.mxu0 %v106
  %516 = vmatpush1.msra.mxu0 %v104
  %517 = vmatprep.subr.mxu0 0.0
  %518 = vmatpush1.msra.mxu0 0.0
  %519 = vmatprep.subr.mxu0 0.0
  %520 = vmatpush1.msra.mxu0 0.0
  %521 = vmatprep.subr.mxu0 0.0
  %522 = vmatpush1.msra.mxu0 0.0
  %523 = vmatprep.subr.mxu0 0.0
  %524 = vmatpush1.msra.mxu0 0.0
  %525 = vmatprep.subr.mxu0 0.0
  %526 = vmatpush1.msra.mxu0 0.0
  %527 = vmatprep.subr.mxu0 0.0
  %528 = vmatpush1.msra.mxu0 0.0
  %529 = vmatprep.subr.mxu0 0.0
  %530 = vmatpush1.msra.mxu0 0.0
  %531 = vmatprep.subr.mxu0 0.0
  %532 = vmatpush1.msra.mxu0 0.0
  %533 = vmatprep.subr.mxu0 0.0
  %534 = vmatpush1.msra.mxu0 0.0
  %535 = vmatprep.subr.mxu0 0.0
  %536 = vmatpush1.msra.mxu0 0.0
  %537 = vmatprep.subr.mxu0 0.0
  %538 = vmatpush1.msra.mxu0 0.0
  %539 = vmatprep.subr.mxu0 0.0
  %540 = vmatpush1.msra.mxu0 0.0
  %541 = vmatprep.subr.mxu0 0.0
  %542 = vmatpush1.msra.mxu0 0.0
  %543 = vmatprep.subr.mxu0 0.0
  %544 = vmatpush1.msra.mxu0 0.0
  %545 = vmatprep.subr.mxu0 0.0
  %546 = vmatpush1.msra.mxu0 0.0
  %547 = vmatprep.subr.mxu0 0.0
  %548 = vmatpush1.msra.mxu0 0.0
  %549 = vmatprep.subr.mxu0 0.0
  %550 = vmatpush1.msra.mxu0 0.0
  %551 = vmatprep.subr.mxu0 0.0
  %552 = vmatpush1.msra.mxu0 0.0
  %553 = vmatprep.subr.mxu0 0.0
  %554 = vmatpush1.msra.mxu0 0.0
  %555 = vmatprep.subr.mxu0 0.0
  %556 = vmatpush1.msra.mxu0 0.0
  %557 = vmatprep.subr.mxu0 0.0
  %558 = vmatpush1.msra.mxu0 0.0
  %559 = vmatprep.subr.mxu0 0.0
  %560 = vmatpush1.msra.mxu0 0.0
  %561 = vmatprep.subr.mxu0 0.0
  %562 = vmatpush1.msra.mxu0 0.0
  %563 = vmatprep.subr.mxu0 0.0
  %564 = vmatpush1.msra.mxu0 0.0
  %565 = vmatprep.subr.mxu0 0.0
  %566 = vmatpush1.msra.mxu0 0.0
  %567 = vmatprep.subr.mxu0 0.0
  %568 = vmatpush1.msra.mxu0 0.0
  %569 = vmatprep.subr.mxu0 0.0
  %570 = vmatpush1.msra.mxu0 0.0
  %571 = vmatprep.subr.mxu0 0.0
  %572 = vmatpush1.msra.mxu0 0.0
  %573 = vmatprep.subr.mxu0 0.0
  %574 = vmatpush1.msra.mxu0 0.0
  %575 = vmatprep.subr.mxu0 0.0
  %576 = vmatpush1.msra.mxu0 0.0
  %577 = vmatprep.subr.mxu0 0.0
  %578 = vmatpush1.msra.mxu0 0.0
  %579 = vmatprep.mubr.f32.mxu0 0.0
  %580 = vmatmul.mubr.f32.gmra.mrb[0].mxu0 %v81
  %v581 = vpop.f32.mrb[0].mxu0
  %v582 = vadd.f32 0.0, %v581
  %v583 = vpop.f32.mrb[0].mxu0
  %v584 = vadd.f32 0.0, %v583
  %585 = vdwg.mxu0
  %586 = vmatprep.subr.mxu0 %v110
  %587 = vmatpush1.msra.mxu0 %v108
  %588 = vmatprep.subr.mxu0 0.0
  %589 = vmatpush1.msra.mxu0 0.0
  %590 = vmatprep.subr.mxu0 0.0
  %591 = vmatpush1.msra.mxu0 0.0
  %592 = vmatprep.subr.mxu0 0.0
  %593 = vmatpush1.msra.mxu0 0.0
  %594 = vmatprep.subr.mxu0 0.0
  %595 = vmatpush1.msra.mxu0 0.0
  %596 = vmatprep.subr.mxu0 0.0
  %597 = vmatpush1.msra.mxu0 0.0
  %598 = vmatprep.subr.mxu0 0.0
  %599 = vmatpush1.msra.mxu0 0.0
  %600 = vmatprep.subr.mxu0 0.0
  %601 = vmatpush1.msra.mxu0 0.0
  %602 = vmatprep.subr.mxu0 0.0
  %603 = vmatpush1.msra.mxu0 0.0
  %604 = vmatprep.subr.mxu0 0.0
  %605 = vmatpush1.msra.mxu0 0.0
  %606 = vmatprep.subr.mxu0 0.0
  %607 = vmatpush1.msra.mxu0 0.0
  %608 = vmatprep.subr.mxu0 0.0
  %609 = vmatpush1.msra.mxu0 0.0
  %610 = vmatprep.subr.mxu0 0.0
  %611 = vmatpush1.msra.mxu0 0.0
  %612 = vmatprep.subr.mxu0 0.0
  %613 = vmatpush1.msra.mxu0 0.0
  %614 = vmatprep.subr.mxu0 0.0
  %615 = vmatpush1.msra.mxu0 0.0
  %616 = vmatprep.subr.mxu0 0.0
  %617 = vmatpush1.msra.mxu0 0.0
  %618 = vmatprep.subr.mxu0 0.0
  %619 = vmatpush1.msra.mxu0 0.0
  %620 = vmatprep.subr.mxu0 0.0
  %621 = vmatpush1.msra.mxu0 0.0
  %622 = vmatprep.subr.mxu0 0.0
  %623 = vmatpush1.msra.mxu0 0.0
  %624 = vmatprep.subr.mxu0 0.0
  %625 = vmatpush1.msra.mxu0 0.0
  %626 = vmatprep.subr.mxu0 0.0
  %627 = vmatpush1.msra.mxu0 0.0
  %628 = vmatprep.subr.mxu0 0.0
  %629 = vmatpush1.msra.mxu0 0.0
  %630 = vmatprep.subr.mxu0 0.0
  %631 = vmatpush1.msra.mxu0 0.0
  %632 = vmatprep.subr.mxu0 0.0
  %633 = vmatpush1.msra.mxu0 0.0
  %634 = vmatprep.subr.mxu0 0.0
  %635 = vmatpush1.msra.mxu0 0.0
  %636 = vmatprep.subr.mxu0 0.0
  %637 = vmatpush1.msra.mxu0 0.0
  %638 = vmatprep.subr.mxu0 0.0
  %639 = vmatpush1.msra.mxu0 0.0
  %640 = vmatprep.subr.mxu0 0.0
  %641 = vmatpush1.msra.mxu0 0.0
  %642 = vmatprep.subr.mxu0 0.0
  %643 = vmatpush1.msra.mxu0 0.0
  %644 = vmatprep.subr.mxu0 0.0
  %645 = vmatpush1.msra.mxu0 0.0
  %646 = vmatprep.subr.mxu0 0.0
  %647 = vmatpush1.msra.mxu0 0.0
  %648 = vmatprep.subr.mxu0 0.0
  %649 = vmatpush1.msra.mxu0 0.0
  %650 = vmatprep.mubr.f32.mxu0 0.0
  %651 = vmatmul.mubr.f32.gmra.mrb[0].mxu0 %v81
  %v652 = vpop.f32.mrb[0].mxu0
  %v653 = vadd.f32 0.0, %v652
  %v654 = vpop.f32.mrb[0].mxu0
  %v655 = vadd.f32 0.0, %v654
  %656 = vdwg.mxu0
  %657 = vmatprep.subr.mxu0 %v114
  %658 = vmatpush1.msra.mxu0 %v112
  %659 = vmatprep.subr.mxu0 0.0
  %660 = vmatpush1.msra.mxu0 0.0
  %661 = vmatprep.subr.mxu0 0.0
  %662 = vmatpush1.msra.mxu0 0.0
  %663 = vmatprep.subr.mxu0 0.0
  %664 = vmatpush1.msra.mxu0 0.0
  %665 = vmatprep.subr.mxu0 0.0
  %666 = vmatpush1.msra.mxu0 0.0
  %667 = vmatprep.subr.mxu0 0.0
  %668 = vmatpush1.msra.mxu0 0.0
  %669 = vmatprep.subr.mxu0 0.0
  %670 = vmatpush1.msra.mxu0 0.0
  %671 = vmatprep.subr.mxu0 0.0
  %672 = vmatpush1.msra.mxu0 0.0
  %673 = vmatprep.subr.mxu0 0.0
  %674 = vmatpush1.msra.mxu0 0.0
  %675 = vmatprep.subr.mxu0 0.0
  %676 = vmatpush1.msra.mxu0 0.0
  %677 = vmatprep.subr.mxu0 0.0
  %678 = vmatpush1.msra.mxu0 0.0
  %679 = vmatprep.subr.mxu0 0.0
  %680 = vmatpush1.msra.mxu0 0.0
  %681 = vmatprep.subr.mxu0 0.0
  %682 = vmatpush1.msra.mxu0 0.0
  %683 = vmatprep.subr.mxu0 0.0
  %684 = vmatpush1.msra.mxu0 0.0
  %685 = vmatprep.subr.mxu0 0.0
  %686 = vmatpush1.msra.mxu0 0.0
  %687 = vmatprep.subr.mxu0 0.0
  %688 = vmatpush1.msra.mxu0 0.0
  %689 = vmatprep.subr.mxu0 0.0
  %690 = vmatpush1.msra.mxu0 0.0
  %691 = vmatprep.subr.mxu0 0.0
  %692 = vmatpush1.msra.mxu0 0.0
  %693 = vmatprep.subr.mxu0 0.0
  %694 = vmatpush1.msra.mxu0 0.0
  %695 = vmatprep.subr.mxu0 0.0
  %696 = vmatpush1.msra.mxu0 0.0
  %697 = vmatprep.subr.mxu0 0.0
  %698 = vmatpush1.msra.mxu0 0.0
  %699 = vmatprep.subr.mxu0 0.0
  %700 = vmatpush1.msra.mxu0 0.0
  %701 = vmatprep.subr.mxu0 0.0
  %702 = vmatpush1.msra.mxu0 0.0
  %703 = vmatprep.subr.mxu0 0.0
  %704 = vmatpush1.msra.mxu0 0.0
  %705 = vmatprep.subr.mxu0 0.0
  %706 = vmatpush1.msra.mxu0 0.0
  %707 = vmatprep.subr.mxu0 0.0
  %708 = vmatpush1.msra.mxu0 0.0
  %709 = vmatprep.subr.mxu0 0.0
  %710 = vmatpush1.msra.mxu0 0.0
  %711 = vmatprep.subr.mxu0 0.0
  %712 = vmatpush1.msra.mxu0 0.0
  %713 = vmatprep.subr.mxu0 0.0
  %714 = vmatpush1.msra.mxu0 0.0
  %715 = vmatprep.subr.mxu0 0.0
  %716 = vmatpush1.msra.mxu0 0.0
  %717 = vmatprep.subr.mxu0 0.0
  %718 = vmatpush1.msra.mxu0 0.0
  %719 = vmatprep.subr.mxu0 0.0
  %720 = vmatpush1.msra.mxu0 0.0
  %721 = vmatprep.mubr.f32.mxu0 0.0
  %722 = vmatmul.mubr.f32.gmra.mrb[0].mxu0 %v81
  %v723 = vpop.f32.mrb[0].mxu0
  %v724 = vadd.f32 0.0, %v723
  %v725 = vpop.f32.mrb[0].mxu0
  %v726 = vadd.f32 0.0, %v725
  %727 = vdwg.mxu0
  %728 = vmatprep.subr.mxu0 %v118
  %729 = vmatpush1.msra.mxu0 %v116
  %730 = vmatprep.subr.mxu0 0.0
  %731 = vmatpush1.msra.mxu0 0.0
  %732 = vmatprep.subr.mxu0 0.0
  %733 = vmatpush1.msra.mxu0 0.0
  %734 = vmatprep.subr.mxu0 0.0
  %735 = vmatpush1.msra.mxu0 0.0
  %736 = vmatprep.subr.mxu0 0.0
  %737 = vmatpush1.msra.mxu0 0.0
  %738 = vmatprep.subr.mxu0 0.0
  %739 = vmatpush1.msra.mxu0 0.0
  %740 = vmatprep.subr.mxu0 0.0
  %741 = vmatpush1.msra.mxu0 0.0
  %742 = vmatprep.subr.mxu0 0.0
  %743 = vmatpush1.msra.mxu0 0.0
  %744 = vmatprep.subr.mxu0 0.0
  %745 = vmatpush1.msra.mxu0 0.0
  %746 = vmatprep.subr.mxu0 0.0
  %747 = vmatpush1.msra.mxu0 0.0
  %748 = vmatprep.subr.mxu0 0.0
  %749 = vmatpush1.msra.mxu0 0.0
  %750 = vmatprep.subr.mxu0 0.0
  %751 = vmatpush1.msra.mxu0 0.0
  %752 = vmatprep.subr.mxu0 0.0
  %753 = vmatpush1.msra.mxu0 0.0
  %754 = vmatprep.subr.mxu0 0.0
  %755 = vmatpush1.msra.mxu0 0.0
  %756 = vmatprep.subr.mxu0 0.0
  %757 = vmatpush1.msra.mxu0 0.0
  %758 = vmatprep.subr.mxu0 0.0
  %759 = vmatpush1.msra.mxu0 0.0
  %760 = vmatprep.subr.mxu0 0.0
  %761 = vmatpush1.msra.mxu0 0.0
  %762 = vmatprep.subr.mxu0 0.0
  %763 = vmatpush1.msra.mxu0 0.0
  %764 = vmatprep.subr.mxu0 0.0
  %765 = vmatpush1.msra.mxu0 0.0
  %766 = vmatprep.subr.mxu0 0.0
  %767 = vmatpush1.msra.mxu0 0.0
  %768 = vmatprep.subr.mxu0 0.0
  %769 = vmatpush1.msra.mxu0 0.0
  %770 = vmatprep.subr.mxu0 0.0
  %771 = vmatpush1.msra.mxu0 0.0
  %772 = vmatprep.subr.mxu0 0.0
  %773 = vmatpush1.msra.mxu0 0.0
  %774 = vmatprep.subr.mxu0 0.0
  %775 = vmatpush1.msra.mxu0 0.0
  %776 = vmatprep.subr.mxu0 0.0
  %777 = vmatpush1.msra.mxu0 0.0
  %778 = vmatprep.subr.mxu0 0.0
  %779 = vmatpush1.msra.mxu0 0.0
  %780 = vmatprep.subr.mxu0 0.0
  %781 = vmatpush1.msra.mxu0 0.0
  %782 = vmatprep.subr.mxu0 0.0
  %783 = vmatpush1.msra.mxu0 0.0
  %784 = vmatprep.subr.mxu0 0.0
  %785 = vmatpush1.msra.mxu0 0.0
  %786 = vmatprep.subr.mxu0 0.0
  %787 = vmatpush1.msra.mxu0 0.0
  %788 = vmatprep.subr.mxu0 0.0
  %789 = vmatpush1.msra.mxu0 0.0
  %790 = vmatprep.subr.mxu0 0.0
  %791 = vmatpush1.msra.mxu0 0.0
  %792 = vmatprep.mubr.f32.mxu0 0.0
  %793 = vmatmul.mubr.f32.gmra.mrb[0].mxu0 %v81
  %v794 = vpop.f32.mrb[0].mxu0
  %v795 = vadd.f32 0.0, %v794
  %v796 = vpop.f32.mrb[0].mxu0
  %v797 = vadd.f32 0.0, %v796
  %798 = vdwg.mxu0
  %799 = vmatprep.subr.mxu0 %v122
  %800 = vmatpush1.msra.mxu0 %v120
  %801 = vmatprep.subr.mxu0 0.0
  %802 = vmatpush1.msra.mxu0 0.0
  %803 = vmatprep.subr.mxu0 0.0
  %804 = vmatpush1.msra.mxu0 0.0
  %805 = vmatprep.subr.mxu0 0.0
  %806 = vmatpush1.msra.mxu0 0.0
  %807 = vmatprep.subr.mxu0 0.0
  %808 = vmatpush1.msra.mxu0 0.0
  %809 = vmatprep.subr.mxu0 0.0
  %810 = vmatpush1.msra.mxu0 0.0
  %811 = vmatprep.subr.mxu0 0.0
  %812 = vmatpush1.msra.mxu0 0.0
  %813 = vmatprep.subr.mxu0 0.0
  %814 = vmatpush1.msra.mxu0 0.0
  %815 = vmatprep.subr.mxu0 0.0
  %816 = vmatpush1.msra.mxu0 0.0
  %817 = vmatprep.subr.mxu0 0.0
  %818 = vmatpush1.msra.mxu0 0.0
  %819 = vmatprep.subr.mxu0 0.0
  %820 = vmatpush1.msra.mxu0 0.0
  %821 = vmatprep.subr.mxu0 0.0
  %822 = vmatpush1.msra.mxu0 0.0
  %823 = vmatprep.subr.mxu0 0.0
  %824 = vmatpush1.msra.mxu0 0.0
  %825 = vmatprep.subr.mxu0 0.0
  %826 = vmatpush1.msra.mxu0 0.0
  %827 = vmatprep.subr.mxu0 0.0
  %828 = vmatpush1.msra.mxu0 0.0
  %829 = vmatprep.subr.mxu0 0.0
  %830 = vmatpush1.msra.mxu0 0.0
  %831 = vmatprep.subr.mxu0 0.0
  %832 = vmatpush1.msra.mxu0 0.0
  %833 = vmatprep.subr.mxu0 0.0
  %834 = vmatpush1.msra.mxu0 0.0
  %835 = vmatprep.subr.mxu0 0.0
  %836 = vmatpush1.msra.mxu0 0.0
  %837 = vmatprep.subr.mxu0 0.0
  %838 = vmatpush1.msra.mxu0 0.0
  %839 = vmatprep.subr.mxu0 0.0
  %840 = vmatpush1.msra.mxu0 0.0
  %841 = vmatprep.subr.mxu0 0.0
  %842 = vmatpush1.msra.mxu0 0.0
  %843 = vmatprep.subr.mxu0 0.0
  %844 = vmatpush1.msra.mxu0 0.0
  %845 = vmatprep.subr.mxu0 0.0
  %846 = vmatpush1.msra.mxu0 0.0
  %847 = vmatprep.subr.mxu0 0.0
  %848 = vmatpush1.msra.mxu0 0.0
  %849 = vmatprep.subr.mxu0 0.0
  %850 = vmatpush1.msra.mxu0 0.0
  %851 = vmatprep.subr.mxu0 0.0
  %852 = vmatpush1.msra.mxu0 0.0
  %853 = vmatprep.subr.mxu0 0.0
  %854 = vmatpush1.msra.mxu0 0.0
  %855 = vmatprep.subr.mxu0 0.0
  %856 = vmatpush1.msra.mxu0 0.0
  %857 = vmatprep.subr.mxu0 0.0
  %858 = vmatpush1.msra.mxu0 0.0
  %859 = vmatprep.subr.mxu0 0.0
  %860 = vmatpush1.msra.mxu0 0.0
  %861 = vmatprep.subr.mxu0 0.0
  %862 = vmatpush1.msra.mxu0 0.0
  %863 = vmatprep.mubr.f32.mxu0 0.0
  %864 = vmatmul.mubr.f32.gmra.mrb[0].mxu0 %v81
  %v865 = vpop.f32.mrb[0].mxu0
  %v866 = vadd.f32 0.0, %v865
  %v867 = vpop.f32.mrb[0].mxu0
  %v868 = vadd.f32 0.0, %v867
  %869 = vdwg.mxu0
  %870 = vmatprep.subr.mxu0 %v126
  %871 = vmatpush1.msra.mxu0 %v124
  %872 = vmatprep.subr.mxu0 0.0
  %873 = vmatpush1.msra.mxu0 0.0
  %874 = vmatprep.subr.mxu0 0.0
  %875 = vmatpush1.msra.mxu0 0.0
  %876 = vmatprep.subr.mxu0 0.0
  %877 = vmatpush1.msra.mxu0 0.0
  %878 = vmatprep.subr.mxu0 0.0
  %879 = vmatpush1.msra.mxu0 0.0
  %880 = vmatprep.subr.mxu0 0.0
  %881 = vmatpush1.msra.mxu0 0.0
  %882 = vmatprep.subr.mxu0 0.0
  %883 = vmatpush1.msra.mxu0 0.0
  %884 = vmatprep.subr.mxu0 0.0
  %885 = vmatpush1.msra.mxu0 0.0
  %886 = vmatprep.subr.mxu0 0.0
  %887 = vmatpush1.msra.mxu0 0.0
  %888 = vmatprep.subr.mxu0 0.0
  %889 = vmatpush1.msra.mxu0 0.0
  %890 = vmatprep.subr.mxu0 0.0
  %891 = vmatpush1.msra.mxu0 0.0
  %892 = vmatprep.subr.mxu0 0.0
  %893 = vmatpush1.msra.mxu0 0.0
  %894 = vmatprep.subr.mxu0 0.0
  %895 = vmatpush1.msra.mxu0 0.0
  %896 = vmatprep.subr.mxu0 0.0
  %897 = vmatpush1.msra.mxu0 0.0
  %898 = vmatprep.subr.mxu0 0.0
  %899 = vmatpush1.msra.mxu0 0.0
  %900 = vmatprep.subr.mxu0 0.0
  %901 = vmatpush1.msra.mxu0 0.0
  %902 = vmatprep.subr.mxu0 0.0
  %903 = vmatpush1.msra.mxu0 0.0
  %904 = vmatprep.subr.mxu0 0.0
  %905 = vmatpush1.msra.mxu0 0.0
  %906 = vmatprep.subr.mxu0 0.0
  %907 = vmatpush1.msra.mxu0 0.0
  %908 = vmatprep.subr.mxu0 0.0
  %909 = vmatpush1.msra.mxu0 0.0
  %910 = vmatprep.subr.mxu0 0.0
  %911 = vmatpush1.msra.mxu0 0.0
  %912 = vmatprep.subr.mxu0 0.0
  %913 = vmatpush1.msra.mxu0 0.0
  %914 = vmatprep.subr.mxu0 0.0
  %915 = vmatpush1.msra.mxu0 0.0
  %916 = vmatprep.subr.mxu0 0.0
  %917 = vmatpush1.msra.mxu0 0.0
  %918 = vmatprep.subr.mxu0 0.0
  %919 = vmatpush1.msra.mxu0 0.0
  %920 = vmatprep.subr.mxu0 0.0
  %921 = vmatpush1.msra.mxu0 0.0
  %922 = vmatprep.subr.mxu0 0.0
  %923 = vmatpush1.msra.mxu0 0.0
  %924 = vmatprep.subr.mxu0 0.0
  %925 = vmatpush1.msra.mxu0 0.0
  %926 = vmatprep.subr.mxu0 0.0
  %927 = vmatpush1.msra.mxu0 0.0
  %928 = vmatprep.subr.mxu0 0.0
  %929 = vmatpush1.msra.mxu0 0.0
  %930 = vmatprep.subr.mxu0 0.0
  %931 = vmatpush1.msra.mxu0 0.0
  %932 = vmatprep.subr.mxu0 0.0
  %933 = vmatpush1.msra.mxu0 0.0
  %934 = vmatprep.mubr.f32.mxu0 0.0
  %935 = vmatmul.mubr.f32.gmra.mrb[0].mxu0 %v81
  %v936 = vpop.f32.mrb[0].mxu0
  %v937 = vadd.f32 0.0, %v936
  %v938 = vpop.f32.mrb[0].mxu0
  %v939 = vadd.f32 0.0, %v938
  %940 = vdwg.mxu0
  %941 = vmatprep.subr.mxu0 %v130
  %942 = vmatpush1.msra.mxu0 %v128
  %943 = vmatprep.subr.mxu0 0.0
  %944 = vmatpush1.msra.mxu0 0.0
  %945 = vmatprep.subr.mxu0 0.0
  %946 = vmatpush1.msra.mxu0 0.0
  %947 = vmatprep.subr.mxu0 0.0
  %948 = vmatpush1.msra.mxu0 0.0
  %949 = vmatprep.subr.mxu0 0.0
  %950 = vmatpush1.msra.mxu0 0.0
  %951 = vmatprep.subr.mxu0 0.0
  %952 = vmatpush1.msra.mxu0 0.0
  %953 = vmatprep.subr.mxu0 0.0
  %954 = vmatpush1.msra.mxu0 0.0
  %955 = vmatprep.subr.mxu0 0.0
  %956 = vmatpush1.msra.mxu0 0.0
  %957 = vmatprep.subr.mxu0 0.0
  %958 = vmatpush1.msra.mxu0 0.0
  %959 = vmatprep.subr.mxu0 0.0
  %960 = vmatpush1.msra.mxu0 0.0
  %961 = vmatprep.subr.mxu0 0.0
  %962 = vmatpush1.msra.mxu0 0.0
  %963 = vmatprep.subr.mxu0 0.0
  %964 = vmatpush1.msra.mxu0 0.0
  %965 = vmatprep.subr.mxu0 0.0
  %966 = vmatpush1.msra.mxu0 0.0
  %967 = vmatprep.subr.mxu0 0.0
  %968 = vmatpush1.msra.mxu0 0.0
  %969 = vmatprep.subr.mxu0 0.0
  %970 = vmatpush1.msra.mxu0 0.0
  %971 = vmatprep.subr.mxu0 0.0
  %972 = vmatpush1.msra.mxu0 0.0
  %973 = vmatprep.subr.mxu0 0.0
  %974 = vmatpush1.msra.mxu0 0.0
  %975 = vmatprep.subr.mxu0 0.0
  %976 = vmatpush1.msra.mxu0 0.0
  %977 = vmatprep.subr.mxu0 0.0
  %978 = vmatpush1.msra.mxu0 0.0
  %979 = vmatprep.subr.mxu0 0.0
  %980 = vmatpush1.msra.mxu0 0.0
  %981 = vmatprep.subr.mxu0 0.0
  %982 = vmatpush1.msra.mxu0 0.0
  %983 = vmatprep.subr.mxu0 0.0
  %984 = vmatpush1.msra.mxu0 0.0
  %985 = vmatprep.subr.mxu0 0.0
  %986 = vmatpush1.msra.mxu0 0.0
  %987 = vmatprep.subr.mxu0 0.0
  %988 = vmatpush1.msra.mxu0 0.0
  %989 = vmatprep.subr.mxu0 0.0
  %990 = vmatpush1.msra.mxu0 0.0
  %991 = vmatprep.subr.mxu0 0.0
  %992 = vmatpush1.msra.mxu0 0.0
  %993 = vmatprep.subr.mxu0 0.0
  %994 = vmatpush1.msra.mxu0 0.0
  %995 = vmatprep.subr.mxu0 0.0
  %996 = vmatpush1.msra.mxu0 0.0
  %997 = vmatprep.subr.mxu0 0.0
  %998 = vmatpush1.msra.mxu0 0.0
  %999 = vmatprep.subr.mxu0 0.0
  %1000 = vmatpush1.msra.mxu0 0.0
  %1001 = vmatprep.subr.mxu0 0.0
  %1002 = vmatpush1.msra.mxu0 0.0
  %1003 = vmatprep.subr.mxu0 0.0
  %1004 = vmatpush1.msra.mxu0 0.0
  %1005 = vmatprep.mubr.f32.mxu0 0.0
  %1006 = vmatmul.mubr.f32.gmra.mrb[0].mxu0 %v81
  %v1007 = vpop.f32.mrb[0].mxu0
  %v1008 = vadd.f32 0.0, %v1007
  %v1009 = vpop.f32.mrb[0].mxu0
  %v1010 = vadd.f32 0.0, %v1009
  %1011 = vdwg.mxu0
  %1012 = vmatprep.subr.mxu0 %v134
  %1013 = vmatpush1.msra.mxu0 %v132
  %1014 = vmatprep.subr.mxu0 0.0
  %1015 = vmatpush1.msra.mxu0 0.0
  %1016 = vmatprep.subr.mxu0 0.0
  %1017 = vmatpush1.msra.mxu0 0.0
  %1018 = vmatprep.subr.mxu0 0.0
  %1019 = vmatpush1.msra.mxu0 0.0
  %1020 = vmatprep.subr.mxu0 0.0
  %1021 = vmatpush1.msra.mxu0 0.0
  %1022 = vmatprep.subr.mxu0 0.0
  %1023 = vmatpush1.msra.mxu0 0.0
  %1024 = vmatprep.subr.mxu0 0.0
  %1025 = vmatpush1.msra.mxu0 0.0
  %1026 = vmatprep.subr.mxu0 0.0
  %1027 = vmatpush1.msra.mxu0 0.0
  %1028 = vmatprep.subr.mxu0 0.0
  %1029 = vmatpush1.msra.mxu0 0.0
  %1030 = vmatprep.subr.mxu0 0.0
  %1031 = vmatpush1.msra.mxu0 0.0
  %1032 = vmatprep.subr.mxu0 0.0
  %1033 = vmatpush1.msra.mxu0 0.0
  %1034 = vmatprep.subr.mxu0 0.0
  %1035 = vmatpush1.msra.mxu0 0.0
  %1036 = vmatprep.subr.mxu0 0.0
  %1037 = vmatpush1.msra.mxu0 0.0
  %1038 = vmatprep.subr.mxu0 0.0
  %1039 = vmatpush1.msra.mxu0 0.0
  %1040 = vmatprep.subr.mxu0 0.0
  %1041 = vmatpush1.msra.mxu0 0.0
  %1042 = vmatprep.subr.mxu0 0.0
  %1043 = vmatpush1.msra.mxu0 0.0
  %1044 = vmatprep.subr.mxu0 0.0
  %1045 = vmatpush1.msra.mxu0 0.0
  %1046 = vmatprep.subr.mxu0 0.0
  %1047 = vmatpush1.msra.mxu0 0.0
  %1048 = vmatprep.subr.mxu0 0.0
  %1049 = vmatpush1.msra.mxu0 0.0
  %1050 = vmatprep.subr.mxu0 0.0
  %1051 = vmatpush1.msra.mxu0 0.0
  %1052 = vmatprep.subr.mxu0 0.0
  %1053 = vmatpush1.msra.mxu0 0.0
  %1054 = vmatprep.subr.mxu0 0.0
  %1055 = vmatpush1.msra.mxu0 0.0
  %1056 = vmatprep.subr.mxu0 0.0
  %1057 = vmatpush1.msra.mxu0 0.0
  %1058 = vmatprep.subr.mxu0 0.0
  %1059 = vmatpush1.msra.mxu0 0.0
  %1060 = vmatprep.subr.mxu0 0.0
  %1061 = vmatpush1.msra.mxu0 0.0
  %1062 = vmatprep.subr.mxu0 0.0
  %1063 = vmatpush1.msra.mxu0 0.0
  %1064 = vmatprep.subr.mxu0 0.0
  %1065 = vmatpush1.msra.mxu0 0.0
  %1066 = vmatprep.subr.mxu0 0.0
  %1067 = vmatpush1.msra.mxu0 0.0
  %1068 = vmatprep.subr.mxu0 0.0
  %1069 = vmatpush1.msra.mxu0 0.0
  %1070 = vmatprep.subr.mxu0 0.0
  %1071 = vmatpush1.msra.mxu0 0.0
  %1072 = vmatprep.subr.mxu0 0.0
  %1073 = vmatpush1.msra.mxu0 0.0
  %1074 = vmatprep.subr.mxu0 0.0
  %1075 = vmatpush1.msra.mxu0 0.0
  %1076 = vmatprep.mubr.f32.mxu0 0.0
  %1077 = vmatmul.mubr.f32.gmra.mrb[0].mxu0 %v81
  %v1078 = vpop.f32.mrb[0].mxu0
  %v1079 = vadd.f32 0.0, %v1078
  %v1080 = vpop.f32.mrb[0].mxu0
  %v1081 = vadd.f32 0.0, %v1080
  %1082 = vdwg.mxu0
  %1083 = vmatprep.subr.mxu0 %v138
  %1084 = vmatpush1.msra.mxu0 %v136
  %1085 = vmatprep.subr.mxu0 0.0
  %1086 = vmatpush1.msra.mxu0 0.0
  %1087 = vmatprep.subr.mxu0 0.0
  %1088 = vmatpush1.msra.mxu0 0.0
  %1089 = vmatprep.subr.mxu0 0.0
  %1090 = vmatpush1.msra.mxu0 0.0
  %1091 = vmatprep.subr.mxu0 0.0
  %1092 = vmatpush1.msra.mxu0 0.0
  %1093 = vmatprep.subr.mxu0 0.0
  %1094 = vmatpush1.msra.mxu0 0.0
  %1095 = vmatprep.subr.mxu0 0.0
  %1096 = vmatpush1.msra.mxu0 0.0
  %1097 = vmatprep.subr.mxu0 0.0
  %1098 = vmatpush1.msra.mxu0 0.0
  %1099 = vmatprep.subr.mxu0 0.0
  %1100 = vmatpush1.msra.mxu0 0.0
  %1101 = vmatprep.subr.mxu0 0.0
  %1102 = vmatpush1.msra.mxu0 0.0
  %1103 = vmatprep.subr.mxu0 0.0
  %1104 = vmatpush1.msra.mxu0 0.0
  %1105 = vmatprep.subr.mxu0 0.0
  %1106 = vmatpush1.msra.mxu0 0.0
  %1107 = vmatprep.subr.mxu0 0.0
  %1108 = vmatpush1.msra.mxu0 0.0
  %1109 = vmatprep.subr.mxu0 0.0
  %1110 = vmatpush1.msra.mxu0 0.0
  %1111 = vmatprep.subr.mxu0 0.0
  %1112 = vmatpush1.msra.mxu0 0.0
  %1113 = vmatprep.subr.mxu0 0.0
  %1114 = vmatpush1.msra.mxu0 0.0
  %1115 = vmatprep.subr.mxu0 0.0
  %1116 = vmatpush1.msra.mxu0 0.0
  %1117 = vmatprep.subr.mxu0 0.0
  %1118 = vmatpush1.msra.mxu0 0.0
  %1119 = vmatprep.subr.mxu0 0.0
  %1120 = vmatpush1.msra.mxu0 0.0
  %1121 = vmatprep.subr.mxu0 0.0
  %1122 = vmatpush1.msra.mxu0 0.0
  %1123 = vmatprep.subr.mxu0 0.0
  %1124 = vmatpush1.msra.mxu0 0.0
  %1125 = vmatprep.subr.mxu0 0.0
  %1126 = vmatpush1.msra.mxu0 0.0
  %1127 = vmatprep.subr.mxu0 0.0
  %1128 = vmatpush1.msra.mxu0 0.0
  %1129 = vmatprep.subr.mxu0 0.0
  %1130 = vmatpush1.msra.mxu0 0.0
  %1131 = vmatprep.subr.mxu0 0.0
  %1132 = vmatpush1.msra.mxu0 0.0
  %1133 = vmatprep.subr.mxu0 0.0
  %1134 = vmatpush1.msra.mxu0 0.0
  %1135 = vmatprep.subr.mxu0 0.0
  %1136 = vmatpush1.msra.mxu0 0.0
  %1137 = vmatprep.subr.mxu0 0.0
  %1138 = vmatpush1.msra.mxu0 0.0
  %1139 = vmatprep.subr.mxu0 0.0
  %1140 = vmatpush1.msra.mxu0 0.0
  %1141 = vmatprep.subr.mxu0 0.0
  %1142 = vmatpush1.msra.mxu0 0.0
  %1143 = vmatprep.subr.mxu0 0.0
  %1144 = vmatpush1.msra.mxu0 0.0
  %1145 = vmatprep.subr.mxu0 0.0
  %1146 = vmatpush1.msra.mxu0 0.0
  %1147 = vmatprep.mubr.f32.mxu0 0.0
  %1148 = vmatmul.mubr.f32.gmra.mrb[0].mxu0 %v81
  %v1149 = vpop.f32.mrb[0].mxu0
  %v1150 = vadd.f32 0.0, %v1149
  %v1151 = vpop.f32.mrb[0].mxu0
  %v1152 = vadd.f32 0.0, %v1151
  %1153 = vdwg.mxu0
  %1154 = vmatprep.subr.mxu0 %v142
  %1155 = vmatpush1.msra.mxu0 %v140
  %1156 = vmatprep.subr.mxu0 0.0
  %1157 = vmatpush1.msra.mxu0 0.0
  %1158 = vmatprep.subr.mxu0 0.0
  %1159 = vmatpush1.msra.mxu0 0.0
  %1160 = vmatprep.subr.mxu0 0.0
  %1161 = vmatpush1.msra.mxu0 0.0
  %1162 = vmatprep.subr.mxu0 0.0
  %1163 = vmatpush1.msra.mxu0 0.0
  %1164 = vmatprep.subr.mxu0 0.0
  %1165 = vmatpush1.msra.mxu0 0.0
  %1166 = vmatprep.subr.mxu0 0.0
  %1167 = vmatpush1.msra.mxu0 0.0
  %1168 = vmatprep.subr.mxu0 0.0
  %1169 = vmatpush1.msra.mxu0 0.0
  %1170 = vmatprep.subr.mxu0 0.0
  %1171 = vmatpush1.msra.mxu0 0.0
  %1172 = vmatprep.subr.mxu0 0.0
  %1173 = vmatpush1.msra.mxu0 0.0
  %1174 = vmatprep.subr.mxu0 0.0
  %1175 = vmatpush1.msra.mxu0 0.0
  %1176 = vmatprep.subr.mxu0 0.0
  %1177 = vmatpush1.msra.mxu0 0.0
  %1178 = vmatprep.subr.mxu0 0.0
  %1179 = vmatpush1.msra.mxu0 0.0
  %1180 = vmatprep.subr.mxu0 0.0
  %1181 = vmatpush1.msra.mxu0 0.0
  %1182 = vmatprep.subr.mxu0 0.0
  %1183 = vmatpush1.msra.mxu0 0.0
  %1184 = vmatprep.subr.mxu0 0.0
  %1185 = vmatpush1.msra.mxu0 0.0
  %1186 = vmatprep.subr.mxu0 0.0
  %1187 = vmatpush1.msra.mxu0 0.0
  %1188 = vmatprep.subr.mxu0 0.0
  %1189 = vmatpush1.msra.mxu0 0.0
  %1190 = vmatprep.subr.mxu0 0.0
  %1191 = vmatpush1.msra.mxu0 0.0
  %1192 = vmatprep.subr.mxu0 0.0
  %1193 = vmatpush1.msra.mxu0 0.0
  %1194 = vmatprep.subr.mxu0 0.0
  %1195 = vmatpush1.msra.mxu0 0.0
  %1196 = vmatprep.subr.mxu0 0.0
  %1197 = vmatpush1.msra.mxu0 0.0
  %1198 = vmatprep.subr.mxu0 0.0
  %1199 = vmatpush1.msra.mxu0 0.0
  %1200 = vmatprep.subr.mxu0 0.0
  %1201 = vmatpush1.msra.mxu0 0.0
  %1202 = vmatprep.subr.mxu0 0.0
  %1203 = vmatpush1.msra.mxu0 0.0
  %1204 = vmatprep.subr.mxu0 0.0
  %1205 = vmatpush1.msra.mxu0 0.0
  %1206 = vmatprep.subr.mxu0 0.0
  %1207 = vmatpush1.msra.mxu0 0.0
  %1208 = vmatprep.subr.mxu0 0.0
  %1209 = vmatpush1.msra.mxu0 0.0
  %1210 = vmatprep.subr.mxu0 0.0
  %1211 = vmatpush1.msra.mxu0 0.0
  %1212 = vmatprep.subr.mxu0 0.0
  %1213 = vmatpush1.msra.mxu0 0.0
  %1214 = vmatprep.subr.mxu0 0.0
  %1215 = vmatpush1.msra.mxu0 0.0
  %1216 = vmatprep.subr.mxu0 0.0
  %1217 = vmatpush1.msra.mxu0 0.0
  %1218 = vmatprep.mubr.f32.mxu0 0.0
  %1219 = vmatmul.mubr.f32.gmra.mrb[0].mxu0 %v81
  %v1220 = vpop.f32.mrb[0].mxu0
  %v1221 = vadd.f32 0.0, %v1220
  %v1222 = vpop.f32.mrb[0].mxu0
  %v1223 = vadd.f32 0.0, %v1222
  %1224 = vdwg.mxu0
  %1225 = vmatprep.subr.mxu0 %v146
  %1226 = vmatpush1.msra.mxu0 %v144
  %1227 = vmatprep.subr.mxu0 0.0
  %1228 = vmatpush1.msra.mxu0 0.0
  %1229 = vmatprep.subr.mxu0 0.0
  %1230 = vmatpush1.msra.mxu0 0.0
  %1231 = vmatprep.subr.mxu0 0.0
  %1232 = vmatpush1.msra.mxu0 0.0
  %1233 = vmatprep.subr.mxu0 0.0
  %1234 = vmatpush1.msra.mxu0 0.0
  %1235 = vmatprep.subr.mxu0 0.0
  %1236 = vmatpush1.msra.mxu0 0.0
  %1237 = vmatprep.subr.mxu0 0.0
  %1238 = vmatpush1.msra.mxu0 0.0
  %1239 = vmatprep.subr.mxu0 0.0
  %1240 = vmatpush1.msra.mxu0 0.0
  %1241 = vmatprep.subr.mxu0 0.0
  %1242 = vmatpush1.msra.mxu0 0.0
  %1243 = vmatprep.subr.mxu0 0.0
  %1244 = vmatpush1.msra.mxu0 0.0
  %1245 = vmatprep.subr.mxu0 0.0
  %1246 = vmatpush1.msra.mxu0 0.0
  %1247 = vmatprep.subr.mxu0 0.0
  %1248 = vmatpush1.msra.mxu0 0.0
  %1249 = vmatprep.subr.mxu0 0.0
  %1250 = vmatpush1.msra.mxu0 0.0
  %1251 = vmatprep.subr.mxu0 0.0
  %1252 = vmatpush1.msra.mxu0 0.0
  %1253 = vmatprep.subr.mxu0 0.0
  %1254 = vmatpush1.msra.mxu0 0.0
  %1255 = vmatprep.subr.mxu0 0.0
  %1256 = vmatpush1.msra.mxu0 0.0
  %1257 = vmatprep.subr.mxu0 0.0
  %1258 = vmatpush1.msra.mxu0 0.0
  %1259 = vmatprep.subr.mxu0 0.0
  %1260 = vmatpush1.msra.mxu0 0.0
  %1261 = vmatprep.subr.mxu0 0.0
  %1262 = vmatpush1.msra.mxu0 0.0
  %1263 = vmatprep.subr.mxu0 0.0
  %1264 = vmatpush1.msra.mxu0 0.0
  %1265 = vmatprep.subr.mxu0 0.0
  %1266 = vmatpush1.msra.mxu0 0.0
  %1267 = vmatprep.subr.mxu0 0.0
  %1268 = vmatpush1.msra.mxu0 0.0
  %1269 = vmatprep.subr.mxu0 0.0
  %1270 = vmatpush1.msra.mxu0 0.0
  %1271 = vmatprep.subr.mxu0 0.0
  %1272 = vmatpush1.msra.mxu0 0.0
  %1273 = vmatprep.subr.mxu0 0.0
  %1274 = vmatpush1.msra.mxu0 0.0
  %1275 = vmatprep.subr.mxu0 0.0
  %1276 = vmatpush1.msra.mxu0 0.0
  %1277 = vmatprep.subr.mxu0 0.0
  %1278 = vmatpush1.msra.mxu0 0.0
  %1279 = vmatprep.subr.mxu0 0.0
  %1280 = vmatpush1.msra.mxu0 0.0
  %1281 = vmatprep.subr.mxu0 0.0
  %1282 = vmatpush1.msra.mxu0 0.0
  %1283 = vmatprep.subr.mxu0 0.0
  %1284 = vmatpush1.msra.mxu0 0.0
  %1285 = vmatprep.subr.mxu0 0.0
  %1286 = vmatpush1.msra.mxu0 0.0
  %1287 = vmatprep.subr.mxu0 0.0
  %1288 = vmatpush1.msra.mxu0 0.0
  %1289 = vmatprep.mubr.f32.mxu0 0.0
  %1290 = vmatmul.mubr.f32.gmra.mrb[0].mxu0 %v81
  %v1291 = vpop.f32.mrb[0].mxu0
  %v1292 = vadd.f32 0.0, %v1291
  %v1293 = vpop.f32.mrb[0].mxu0
  %v1294 = vadd.f32 0.0, %v1293
  %1295 = vdwg.mxu0
  %1296 = vmatprep.subr.mxu0 %v150
  %1297 = vmatpush1.msra.mxu0 %v148
  %1298 = vmatprep.subr.mxu0 0.0
  %1299 = vmatpush1.msra.mxu0 0.0
  %1300 = vmatprep.subr.mxu0 0.0
  %1301 = vmatpush1.msra.mxu0 0.0
  %1302 = vmatprep.subr.mxu0 0.0
  %1303 = vmatpush1.msra.mxu0 0.0
  %1304 = vmatprep.subr.mxu0 0.0
  %1305 = vmatpush1.msra.mxu0 0.0
  %1306 = vmatprep.subr.mxu0 0.0
  %1307 = vmatpush1.msra.mxu0 0.0
  %1308 = vmatprep.subr.mxu0 0.0
  %1309 = vmatpush1.msra.mxu0 0.0
  %1310 = vmatprep.subr.mxu0 0.0
  %1311 = vmatpush1.msra.mxu0 0.0
  %1312 = vmatprep.subr.mxu0 0.0
  %1313 = vmatpush1.msra.mxu0 0.0
  %1314 = vmatprep.subr.mxu0 0.0
  %1315 = vmatpush1.msra.mxu0 0.0
  %1316 = vmatprep.subr.mxu0 0.0
  %1317 = vmatpush1.msra.mxu0 0.0
  %1318 = vmatprep.subr.mxu0 0.0
  %1319 = vmatpush1.msra.mxu0 0.0
  %1320 = vmatprep.subr.mxu0 0.0
  %1321 = vmatpush1.msra.mxu0 0.0
  %1322 = vmatprep.subr.mxu0 0.0
  %1323 = vmatpush1.msra.mxu0 0.0
  %1324 = vmatprep.subr.mxu0 0.0
  %1325 = vmatpush1.msra.mxu0 0.0
  %1326 = vmatprep.subr.mxu0 0.0
  %1327 = vmatpush1.msra.mxu0 0.0
  %1328 = vmatprep.subr.mxu0 0.0
  %1329 = vmatpush1.msra.mxu0 0.0
  %1330 = vmatprep.subr.mxu0 0.0
  %1331 = vmatpush1.msra.mxu0 0.0
  %1332 = vmatprep.subr.mxu0 0.0
  %1333 = vmatpush1.msra.mxu0 0.0
  %1334 = vmatprep.subr.mxu0 0.0
  %1335 = vmatpush1.msra.mxu0 0.0
  %1336 = vmatprep.subr.mxu0 0.0
  %1337 = vmatpush1.msra.mxu0 0.0
  %1338 = vmatprep.subr.mxu0 0.0
  %1339 = vmatpush1.msra.mxu0 0.0
  %1340 = vmatprep.subr.mxu0 0.0
  %1341 = vmatpush1.msra.mxu0 0.0
  %1342 = vmatprep.subr.mxu0 0.0
  %1343 = vmatpush1.msra.mxu0 0.0
  %1344 = vmatprep.subr.mxu0 0.0
  %1345 = vmatpush1.msra.mxu0 0.0
  %1346 = vmatprep.subr.mxu0 0.0
  %1347 = vmatpush1.msra.mxu0 0.0
  %1348 = vmatprep.subr.mxu0 0.0
  %1349 = vmatpush1.msra.mxu0 0.0
  %1350 = vmatprep.subr.mxu0 0.0
  %1351 = vmatpush1.msra.mxu0 0.0
  %1352 = vmatprep.subr.mxu0 0.0
  %1353 = vmatpush1.msra.mxu0 0.0
  %1354 = vmatprep.subr.mxu0 0.0
  %1355 = vmatpush1.msra.mxu0 0.0
  %1356 = vmatprep.subr.mxu0 0.0
  %1357 = vmatpush1.msra.mxu0 0.0
  %1358 = vmatprep.subr.mxu0 0.0
  %1359 = vmatpush1.msra.mxu0 0.0
  %1360 = vmatprep.mubr.f32.mxu0 0.0
  %1361 = vmatmul.mubr.f32.gmra.mrb[0].mxu0 %v81
  %v1362 = vpop.f32.mrb[0].mxu0
  %v1363 = vadd.f32 0.0, %v1362
  %v1364 = vpop.f32.mrb[0].mxu0
  %v1365 = vadd.f32 0.0, %v1364
  %1366 = vdwg.mxu0
  %1367 = vmatprep.subr.mxu0 %v154
  %1368 = vmatpush1.msra.mxu0 %v152
  %1369 = vmatprep.subr.mxu0 0.0
  %1370 = vmatpush1.msra.mxu0 0.0
  %1371 = vmatprep.subr.mxu0 0.0
  %1372 = vmatpush1.msra.mxu0 0.0
  %1373 = vmatprep.subr.mxu0 0.0
  %1374 = vmatpush1.msra.mxu0 0.0
  %1375 = vmatprep.subr.mxu0 0.0
  %1376 = vmatpush1.msra.mxu0 0.0
  %1377 = vmatprep.subr.mxu0 0.0
  %1378 = vmatpush1.msra.mxu0 0.0
  %1379 = vmatprep.subr.mxu0 0.0
  %1380 = vmatpush1.msra.mxu0 0.0
  %1381 = vmatprep.subr.mxu0 0.0
  %1382 = vmatpush1.msra.mxu0 0.0
  %1383 = vmatprep.subr.mxu0 0.0
  %1384 = vmatpush1.msra.mxu0 0.0
  %1385 = vmatprep.subr.mxu0 0.0
  %1386 = vmatpush1.msra.mxu0 0.0
  %1387 = vmatprep.subr.mxu0 0.0
  %1388 = vmatpush1.msra.mxu0 0.0
  %1389 = vmatprep.subr.mxu0 0.0
  %1390 = vmatpush1.msra.mxu0 0.0
  %1391 = vmatprep.subr.mxu0 0.0
  %1392 = vmatpush1.msra.mxu0 0.0
  %1393 = vmatprep.subr.mxu0 0.0
  %1394 = vmatpush1.msra.mxu0 0.0
  %1395 = vmatprep.subr.mxu0 0.0
  %1396 = vmatpush1.msra.mxu0 0.0
  %1397 = vmatprep.subr.mxu0 0.0
  %1398 = vmatpush1.msra.mxu0 0.0
  %1399 = vmatprep.subr.mxu0 0.0
  %1400 = vmatpush1.msra.mxu0 0.0
  %1401 = vmatprep.subr.mxu0 0.0
  %1402 = vmatpush1.msra.mxu0 0.0
  %1403 = vmatprep.subr.mxu0 0.0
  %1404 = vmatpush1.msra.mxu0 0.0
  %1405 = vmatprep.subr.mxu0 0.0
  %1406 = vmatpush1.msra.mxu0 0.0
  %1407 = vmatprep.subr.mxu0 0.0
  %1408 = vmatpush1.msra.mxu0 0.0
  %1409 = vmatprep.subr.mxu0 0.0
  %1410 = vmatpush1.msra.mxu0 0.0
  %1411 = vmatprep.subr.mxu0 0.0
  %1412 = vmatpush1.msra.mxu0 0.0
  %1413 = vmatprep.subr.mxu0 0.0
  %1414 = vmatpush1.msra.mxu0 0.0
  %1415 = vmatprep.subr.mxu0 0.0
  %1416 = vmatpush1.msra.mxu0 0.0
  %1417 = vmatprep.subr.mxu0 0.0
  %1418 = vmatpush1.msra.mxu0 0.0
  %1419 = vmatprep.subr.mxu0 0.0
  %1420 = vmatpush1.msra.mxu0 0.0
  %1421 = vmatprep.subr.mxu0 0.0
  %1422 = vmatpush1.msra.mxu0 0.0
  %1423 = vmatprep.subr.mxu0 0.0
  %1424 = vmatpush1.msra.mxu0 0.0
  %1425 = vmatprep.subr.mxu0 0.0
  %1426 = vmatpush1.msra.mxu0 0.0
  %1427 = vmatprep.subr.mxu0 0.0
  %1428 = vmatpush1.msra.mxu0 0.0
  %1429 = vmatprep.subr.mxu0 0.0
  %1430 = vmatpush1.msra.mxu0 0.0
  %1431 = vmatprep.mubr.f32.mxu0 0.0
  %1432 = vmatmul.mubr.f32.gmra.mrb[0].mxu0 %v81
  %v1433 = vpop.f32.mrb[0].mxu0
  %v1434 = vadd.f32 0.0, %v1433
  %v1435 = vpop.f32.mrb[0].mxu0
  %v1436 = vadd.f32 0.0, %v1435
  %1437 = vdwg.mxu0
  %1438 = vmatprep.subr.mxu0 %v158
  %1439 = vmatpush1.msra.mxu0 %v156
  %1440 = vmatprep.subr.mxu0 0.0
  %1441 = vmatpush1.msra.mxu0 0.0
  %1442 = vmatprep.subr.mxu0 0.0
  %1443 = vmatpush1.msra.mxu0 0.0
  %1444 = vmatprep.subr.mxu0 0.0
  %1445 = vmatpush1.msra.mxu0 0.0
  %1446 = vmatprep.subr.mxu0 0.0
  %1447 = vmatpush1.msra.mxu0 0.0
  %1448 = vmatprep.subr.mxu0 0.0
  %1449 = vmatpush1.msra.mxu0 0.0
  %1450 = vmatprep.subr.mxu0 0.0
  %1451 = vmatpush1.msra.mxu0 0.0
  %1452 = vmatprep.subr.mxu0 0.0
  %1453 = vmatpush1.msra.mxu0 0.0
  %1454 = vmatprep.subr.mxu0 0.0
  %1455 = vmatpush1.msra.mxu0 0.0
  %1456 = vmatprep.subr.mxu0 0.0
  %1457 = vmatpush1.msra.mxu0 0.0
  %1458 = vmatprep.subr.mxu0 0.0
  %1459 = vmatpush1.msra.mxu0 0.0
  %1460 = vmatprep.subr.mxu0 0.0
  %1461 = vmatpush1.msra.mxu0 0.0
  %1462 = vmatprep.subr.mxu0 0.0
  %1463 = vmatpush1.msra.mxu0 0.0
  %1464 = vmatprep.subr.mxu0 0.0
  %1465 = vmatpush1.msra.mxu0 0.0
  %1466 = vmatprep.subr.mxu0 0.0
  %1467 = vmatpush1.msra.mxu0 0.0
  %1468 = vmatprep.subr.mxu0 0.0
  %1469 = vmatpush1.msra.mxu0 0.0
  %1470 = vmatprep.subr.mxu0 0.0
  %1471 = vmatpush1.msra.mxu0 0.0
  %1472 = vmatprep.subr.mxu0 0.0
  %1473 = vmatpush1.msra.mxu0 0.0
  %1474 = vmatprep.subr.mxu0 0.0
  %1475 = vmatpush1.msra.mxu0 0.0
  %1476 = vmatprep.subr.mxu0 0.0
  %1477 = vmatpush1.msra.mxu0 0.0
  %1478 = vmatprep.subr.mxu0 0.0
  %1479 = vmatpush1.msra.mxu0 0.0
  %1480 = vmatprep.subr.mxu0 0.0
  %1481 = vmatpush1.msra.mxu0 0.0
  %1482 = vmatprep.subr.mxu0 0.0
  %1483 = vmatpush1.msra.mxu0 0.0
  %1484 = vmatprep.subr.mxu0 0.0
  %1485 = vmatpush1.msra.mxu0 0.0
  %1486 = vmatprep.subr.mxu0 0.0
  %1487 = vmatpush1.msra.mxu0 0.0
  %1488 = vmatprep.subr.mxu0 0.0
  %1489 = vmatpush1.msra.mxu0 0.0
  %1490 = vmatprep.subr.mxu0 0.0
  %1491 = vmatpush1.msra.mxu0 0.0
  %1492 = vmatprep.subr.mxu0 0.0
  %1493 = vmatpush1.msra.mxu0 0.0
  %1494 = vmatprep.subr.mxu0 0.0
  %1495 = vmatpush1.msra.mxu0 0.0
  %1496 = vmatprep.subr.mxu0 0.0
  %1497 = vmatpush1.msra.mxu0 0.0
  %1498 = vmatprep.subr.mxu0 0.0
  %1499 = vmatpush1.msra.mxu0 0.0
  %1500 = vmatprep.subr.mxu0 0.0
  %1501 = vmatpush1.msra.mxu0 0.0
  %1502 = vmatprep.mubr.f32.mxu0 0.0
  %1503 = vmatmul.mubr.f32.gmra.mrb[0].mxu0 %v81
  %v1504 = vpop.f32.mrb[0].mxu0
  %v1505 = vadd.f32 0.0, %v1504
  %v1506 = vpop.f32.mrb[0].mxu0
  %v1507 = vadd.f32 0.0, %v1506
  %1508 = vdwg.mxu0
  %v1509 = vadd.f32 %v38, %v227
  %v1510 = vadd.f32 %v38, %v229
  %v1511 = vadd.f32 %v38, %v298
  %v1512 = vadd.f32 %v38, %v300
  %v1513 = vadd.f32 %v38, %v369
  %v1514 = vadd.f32 %v38, %v371
  %v1515 = vadd.f32 %v38, %v440
  %v1516 = vadd.f32 %v38, %v442
  %v1517 = vadd.f32 %v38, %v511
  %v1518 = vadd.f32 %v38, %v513
  %v1519 = vadd.f32 %v38, %v582
  %v1520 = vadd.f32 %v38, %v584
  %v1521 = vadd.f32 %v38, %v653
  %v1522 = vadd.f32 %v38, %v655
  %v1523 = vadd.f32 %v38, %v724
  %v1524 = vadd.f32 %v38, %v726
  %v1525 = vadd.f32 %v38, %v795
  %v1526 = vadd.f32 %v38, %v797
  %v1527 = vadd.f32 %v38, %v866
  %v1528 = vadd.f32 %v38, %v868
  %v1529 = vadd.f32 %v38, %v937
  %v1530 = vadd.f32 %v38, %v939
  %v1531 = vadd.f32 %v38, %v1008
  %v1532 = vadd.f32 %v38, %v1010
  %v1533 = vadd.f32 %v38, %v1079
  %v1534 = vadd.f32 %v38, %v1081
  %v1535 = vadd.f32 %v38, %v1150
  %v1536 = vadd.f32 %v38, %v1152
  %v1537 = vadd.f32 %v38, %v1221
  %v1538 = vadd.f32 %v38, %v1223
  %v1539 = vadd.f32 %v38, %v1292
  %v1540 = vadd.f32 %v38, %v1294
  %v1541 = vadd.f32 %v38, %v1363
  %v1542 = vadd.f32 %v38, %v1365
  %v1543 = vadd.f32 %v38, %v1434
  %v1544 = vadd.f32 %v38, %v1436
  %v1545 = vadd.f32 %v38, %v1505
  %v1546 = vadd.f32 %v38, %v1507
  %s1547 = scalar_lea.vmem %s1, 8
  %v1548 = vld [vmem:[%s1547] sm:$0xff]
  %1550 = vrot.lane.b32.xlu0 %v14, 127
  %v1551 = vpop.permute.xlu0 %1550
  %1552 = vrot.lane.b32.xlu0 %v60, 127
  %v1553 = vpop.permute.xlu0 %1552
  %1554 = vrot.lane.b32.xlu0 %v15, 127
  %v1555 = vpop.permute.xlu0 %1554
  %1556 = vrot.lane.b32.xlu0 %v61, 127
  %v1557 = vpop.permute.xlu0 %1556
  %1558 = vrot.lane.b32.xlu0 %v16, 127
  %v1559 = vpop.permute.xlu0 %1558
  %1560 = vrot.lane.b32.xlu0 %v62, 127
  %v1561 = vpop.permute.xlu0 %1560
  %1562 = vrot.lane.b32.xlu0 %v17, 127
  %v1563 = vpop.permute.xlu0 %1562
  %1564 = vrot.lane.b32.xlu0 %v63, 127
  %v1565 = vpop.permute.xlu0 %1564
  %1566 = vrot.lane.b32.xlu0 %v18, 127
  %v1567 = vpop.permute.xlu0 %1566
  %1568 = vrot.lane.b32.xlu0 %v64, 127
  %v1569 = vpop.permute.xlu0 %1568
  %1570 = vrot.lane.b32.xlu0 %v19, 127
  %v1571 = vpop.permute.xlu0 %1570
  %1572 = vrot.lane.b32.xlu0 %v65, 127
  %v1573 = vpop.permute.xlu0 %1572
  %1574 = vrot.lane.b32.xlu0 %v20, 127
  %v1575 = vpop.permute.xlu0 %1574
  %1576 = vrot.lane.b32.xlu0 %v66, 127
  %v1577 = vpop.permute.xlu0 %1576
  %1578 = vrot.lane.b32.xlu0 %v21, 127
  %v1579 = vpop.permute.xlu0 %1578
  %1580 = vrot.lane.b32.xlu0 %v67, 127
  %v1581 = vpop.permute.xlu0 %1580
  %1582 = vrot.lane.b32.xlu0 %v22, 127
  %v1583 = vpop.permute.xlu0 %1582
  %1584 = vrot.lane.b32.xlu0 %v68, 127
  %v1585 = vpop.permute.xlu0 %1584
  %1586 = vrot.lane.b32.xlu0 %v23, 127
  %v1587 = vpop.permute.xlu0 %1586
  %1588 = vrot.lane.b32.xlu0 %v69, 127
  %v1589 = vpop.permute.xlu0 %1588
  %1590 = vrot.lane.b32.xlu0 %v24, 127
  %v1591 = vpop.permute.xlu0 %1590
  %1592 = vrot.lane.b32.xlu0 %v70, 127
  %v1593 = vpop.permute.xlu0 %1592
  %1594 = vrot.lane.b32.xlu0 %v25, 127
  %v1595 = vpop.permute.xlu0 %1594
  %1596 = vrot.lane.b32.xlu0 %v71, 127
  %v1597 = vpop.permute.xlu0 %1596
  %1598 = vrot.lane.b32.xlu0 %v26, 127
  %v1599 = vpop.permute.xlu0 %1598
  %1600 = vrot.lane.b32.xlu0 %v72, 127
  %v1601 = vpop.permute.xlu0 %1600
  %1602 = vrot.lane.b32.xlu0 %v27, 127
  %v1603 = vpop.permute.xlu0 %1602
  %1604 = vrot.lane.b32.xlu0 %v73, 127
  %v1605 = vpop.permute.xlu0 %1604
  %1606 = vrot.lane.b32.xlu0 %v28, 127
  %v1607 = vpop.permute.xlu0 %1606
  %1608 = vrot.lane.b32.xlu0 %v74, 127
  %v1609 = vpop.permute.xlu0 %1608
  %1610 = vrot.lane.b32.xlu0 %v29, 127
  %v1611 = vpop.permute.xlu0 %1610
  %1612 = vrot.lane.b32.xlu0 %v75, 127
  %v1613 = vpop.permute.xlu0 %1612
  %1614 = vrot.lane.b32.xlu0 %v30, 127
  %v1615 = vpop.permute.xlu0 %1614
  %1616 = vrot.lane.b32.xlu0 %v76, 127
  %v1617 = vpop.permute.xlu0 %1616
  %1618 = vrot.lane.b32.xlu0 %v31, 127
  %v1619 = vpop.permute.xlu0 %1618
  %1620 = vrot.lane.b32.xlu0 %v77, 127
  %v1621 = vpop.permute.xlu0 %1620
  %1622 = vrot.lane.b32.xlu0 %v32, 127
  %v1623 = vpop.permute.xlu0 %1622
  %1624 = vrot.lane.b32.xlu0 %v78, 127
  %v1625 = vpop.permute.xlu0 %1624
  %1626 = vrot.lane.b32.xlu0 %v33, 127
  %v1627 = vpop.permute.xlu0 %1626
  %vm1628 = vcmask 1039360
  %v1629 = vsel %vm1628, %v1551, %v1553
  %v1630 = vsel %vm1628, %v1553, %v1555
  %v1631 = vsel %vm1628, %v1555, %v1557
  %v1632 = vsel %vm1628, %v1557, %v1559
  %v1633 = vsel %vm1628, %v1559, %v1561
  %v1634 = vsel %vm1628, %v1561, %v1563
  %v1635 = vsel %vm1628, %v1563, %v1565
  %v1636 = vsel %vm1628, %v1565, %v1567
  %v1637 = vsel %vm1628, %v1567, %v1569
  %v1638 = vsel %vm1628, %v1569, %v1571
  %v1639 = vsel %vm1628, %v1571, %v1573
  %v1640 = vsel %vm1628, %v1573, %v1575
  %v1641 = vsel %vm1628, %v1575, %v1577
  %v1642 = vsel %vm1628, %v1577, %v1579
  %v1643 = vsel %vm1628, %v1579, %v1581
  %v1644 = vsel %vm1628, %v1581, %v1583
  %v1645 = vsel %vm1628, %v1583, %v1585
  %v1646 = vsel %vm1628, %v1585, %v1587
  %v1647 = vsel %vm1628, %v1587, %v1589
  %v1648 = vsel %vm1628, %v1589, %v1591
  %v1649 = vsel %vm1628, %v1591, %v1593
  %v1650 = vsel %vm1628, %v1593, %v1595
  %v1651 = vsel %vm1628, %v1595, %v1597
  %v1652 = vsel %vm1628, %v1597, %v1599
  %v1653 = vsel %vm1628, %v1599, %v1601
  %v1654 = vsel %vm1628, %v1601, %v1603
  %v1655 = vsel %vm1628, %v1603, %v1605
  %v1656 = vsel %vm1628, %v1605, %v1607
  %v1657 = vsel %vm1628, %v1607, %v1609
  %v1658 = vsel %vm1628, %v1609, %v1611
  %v1659 = vsel %vm1628, %v1611, %v1613
  %v1660 = vsel %vm1628, %v1613, %v1615
  %v1661 = vsel %vm1628, %v1615, %v1617
  %v1662 = vsel %vm1628, %v1617, %v1619
  %v1663 = vsel %vm1628, %v1619, %v1621
  %v1664 = vsel %vm1628, %v1621, %v1623
  %v1665 = vsel %vm1628, %v1623, %v1625
  %v1666 = vsel %vm1628, %v1625, %v1627
  %v1668 = vsel %vm79, %v1548, 0
  %v1670 = vsel %vm83, %v1629, 0
  %v1672 = vsel %vm83, %v1630, 0
  %v1674 = vsel %vm83, %v1631, 0
  %v1676 = vsel %vm83, %v1632, 0
  %v1678 = vsel %vm83, %v1633, 0
  %v1680 = vsel %vm83, %v1634, 0
  %v1682 = vsel %vm83, %v1635, 0
  %v1684 = vsel %vm83, %v1636, 0
  %v1686 = vsel %vm83, %v1637, 0
  %v1688 = vsel %vm83, %v1638, 0
  %v1690 = vsel %vm83, %v1639, 0
  %v1692 = vsel %vm83, %v1640, 0
  %v1694 = vsel %vm83, %v1641, 0
  %v1696 = vsel %vm83, %v1642, 0
  %v1698 = vsel %vm83, %v1643, 0
  %v1700 = vsel %vm83, %v1644, 0
  %v1702 = vsel %vm83, %v1645, 0
  %v1704 = vsel %vm83, %v1646, 0
  %v1706 = vsel %vm83, %v1647, 0
  %v1708 = vsel %vm83, %v1648, 0
  %v1710 = vsel %vm83, %v1649, 0
  %v1712 = vsel %vm83, %v1650, 0
  %v1714 = vsel %vm83, %v1651, 0
  %v1716 = vsel %vm83, %v1652, 0
  %v1718 = vsel %vm83, %v1653, 0
  %v1720 = vsel %vm83, %v1654, 0
  %v1722 = vsel %vm83, %v1655, 0
  %v1724 = vsel %vm83, %v1656, 0
  %v1726 = vsel %vm83, %v1657, 0
  %v1728 = vsel %vm83, %v1658, 0
  %v1730 = vsel %vm83, %v1659, 0
  %v1732 = vsel %vm83, %v1660, 0
  %v1734 = vsel %vm83, %v1661, 0
  %v1736 = vsel %vm83, %v1662, 0
  %v1738 = vsel %vm83, %v1663, 0
  %v1740 = vsel %vm83, %v1664, 0
  %v1742 = vsel %vm83, %v1665, 0
  %v1744 = vsel %vm83, %v1666, 0
  %1746 = vmatprep.subr.mxu0 %v1672
  %1747 = vmatpush1.msra.mxu0 %v1670
  %1748 = vmatprep.subr.mxu0 0.0
  %1749 = vmatpush1.msra.mxu0 0.0
  %1750 = vmatprep.subr.mxu0 0.0
  %1751 = vmatpush1.msra.mxu0 0.0
  %1752 = vmatprep.subr.mxu0 0.0
  %1753 = vmatpush1.msra.mxu0 0.0
  %1754 = vmatprep.subr.mxu0 0.0
  %1755 = vmatpush1.msra.mxu0 0.0
  %1756 = vmatprep.subr.mxu0 0.0
  %1757 = vmatpush1.msra.mxu0 0.0
  %1758 = vmatprep.subr.mxu0 0.0
  %1759 = vmatpush1.msra.mxu0 0.0
  %1760 = vmatprep.subr.mxu0 0.0
  %1761 = vmatpush1.msra.mxu0 0.0
  %1762 = vmatprep.subr.mxu0 0.0
  %1763 = vmatpush1.msra.mxu0 0.0
  %1764 = vmatprep.subr.mxu0 0.0
  %1765 = vmatpush1.msra.mxu0 0.0
  %1766 = vmatprep.subr.mxu0 0.0
  %1767 = vmatpush1.msra.mxu0 0.0
  %1768 = vmatprep.subr.mxu0 0.0
  %1769 = vmatpush1.msra.mxu0 0.0
  %1770 = vmatprep.subr.mxu0 0.0
  %1771 = vmatpush1.msra.mxu0 0.0
  %1772 = vmatprep.subr.mxu0 0.0
  %1773 = vmatpush1.msra.mxu0 0.0
  %1774 = vmatprep.subr.mxu0 0.0
  %1775 = vmatpush1.msra.mxu0 0.0
  %1776 = vmatprep.subr.mxu0 0.0
  %1777 = vmatpush1.msra.mxu0 0.0
  %1778 = vmatprep.subr.mxu0 0.0
  %1779 = vmatpush1.msra.mxu0 0.0
  %1780 = vmatprep.subr.mxu0 0.0
  %1781 = vmatpush1.msra.mxu0 0.0
  %1782 = vmatprep.subr.mxu0 0.0
  %1783 = vmatpush1.msra.mxu0 0.0
  %1784 = vmatprep.subr.mxu0 0.0
  %1785 = vmatpush1.msra.mxu0 0.0
  %1786 = vmatprep.subr.mxu0 0.0
  %1787 = vmatpush1.msra.mxu0 0.0
  %1788 = vmatprep.subr.mxu0 0.0
  %1789 = vmatpush1.msra.mxu0 0.0
  %1790 = vmatprep.subr.mxu0 0.0
  %1791 = vmatpush1.msra.mxu0 0.0
  %1792 = vmatprep.subr.mxu0 0.0
  %1793 = vmatpush1.msra.mxu0 0.0
  %1794 = vmatprep.subr.mxu0 0.0
  %1795 = vmatpush1.msra.mxu0 0.0
  %1796 = vmatprep.subr.mxu0 0.0
  %1797 = vmatpush1.msra.mxu0 0.0
  %1798 = vmatprep.subr.mxu0 0.0
  %1799 = vmatpush1.msra.mxu0 0.0
  %1800 = vmatprep.subr.mxu0 0.0
  %1801 = vmatpush1.msra.mxu0 0.0
  %1802 = vmatprep.subr.mxu0 0.0
  %1803 = vmatpush1.msra.mxu0 0.0
  %1804 = vmatprep.subr.mxu0 0.0
  %1805 = vmatpush1.msra.mxu0 0.0
  %1806 = vmatprep.subr.mxu0 0.0
  %1807 = vmatpush1.msra.mxu0 0.0
  %1808 = vmatprep.subr.mxu0 0.0
  %1809 = vmatpush1.msra.mxu0 0.0
  %1810 = vmatprep.mubr.f32.mxu0 0.0
  %1811 = vmatmul.mubr.f32.gmra.mrb[0].mxu0 %v1668
  %v1812 = vpop.f32.mrb[0].mxu0
  %v1813 = vadd.f32 0.0, %v1812
  %v1814 = vpop.f32.mrb[0].mxu0
  %v1815 = vadd.f32 0.0, %v1814
  %1816 = vdwg.mxu0
  %1817 = vmatprep.subr.mxu0 %v1676
  %1818 = vmatpush1.msra.mxu0 %v1674
  %1819 = vmatprep.subr.mxu0 0.0
  %1820 = vmatpush1.msra.mxu0 0.0
  %1821 = vmatprep.subr.mxu0 0.0
  %1822 = vmatpush1.msra.mxu0 0.0
  %1823 = vmatprep.subr.mxu0 0.0
  %1824 = vmatpush1.msra.mxu0 0.0
  %1825 = vmatprep.subr.mxu0 0.0
  %1826 = vmatpush1.msra.mxu0 0.0
  %1827 = vmatprep.subr.mxu0 0.0
  %1828 = vmatpush1.msra.mxu0 0.0
  %1829 = vmatprep.subr.mxu0 0.0
  %1830 = vmatpush1.msra.mxu0 0.0
  %1831 = vmatprep.subr.mxu0 0.0
  %1832 = vmatpush1.msra.mxu0 0.0
  %1833 = vmatprep.subr.mxu0 0.0
  %1834 = vmatpush1.msra.mxu0 0.0
  %1835 = vmatprep.subr.mxu0 0.0
  %1836 = vmatpush1.msra.mxu0 0.0
  %1837 = vmatprep.subr.mxu0 0.0
  %1838 = vmatpush1.msra.mxu0 0.0
  %1839 = vmatprep.subr.mxu0 0.0
  %1840 = vmatpush1.msra.mxu0 0.0
  %1841 = vmatprep.subr.mxu0 0.0
  %1842 = vmatpush1.msra.mxu0 0.0
  %1843 = vmatprep.subr.mxu0 0.0
  %1844 = vmatpush1.msra.mxu0 0.0
  %1845 = vmatprep.subr.mxu0 0.0
  %1846 = vmatpush1.msra.mxu0 0.0
  %1847 = vmatprep.subr.mxu0 0.0
  %1848 = vmatpush1.msra.mxu0 0.0
  %1849 = vmatprep.subr.mxu0 0.0
  %1850 = vmatpush1.msra.mxu0 0.0
  %1851 = vmatprep.subr.mxu0 0.0
  %1852 = vmatpush1.msra.mxu0 0.0
  %1853 = vmatprep.subr.mxu0 0.0
  %1854 = vmatpush1.msra.mxu0 0.0
  %1855 = vmatprep.subr.mxu0 0.0
  %1856 = vmatpush1.msra.mxu0 0.0
  %1857 = vmatprep.subr.mxu0 0.0
  %1858 = vmatpush1.msra.mxu0 0.0
  %1859 = vmatprep.subr.mxu0 0.0
  %1860 = vmatpush1.msra.mxu0 0.0
  %1861 = vmatprep.subr.mxu0 0.0
  %1862 = vmatpush1.msra.mxu0 0.0
  %1863 = vmatprep.subr.mxu0 0.0
  %1864 = vmatpush1.msra.mxu0 0.0
  %1865 = vmatprep.subr.mxu0 0.0
  %1866 = vmatpush1.msra.mxu0 0.0
  %1867 = vmatprep.subr.mxu0 0.0
  %1868 = vmatpush1.msra.mxu0 0.0
  %1869 = vmatprep.subr.mxu0 0.0
  %1870 = vmatpush1.msra.mxu0 0.0
  %1871 = vmatprep.subr.mxu0 0.0
  %1872 = vmatpush1.msra.mxu0 0.0
  %1873 = vmatprep.subr.mxu0 0.0
  %1874 = vmatpush1.msra.mxu0 0.0
  %1875 = vmatprep.subr.mxu0 0.0
  %1876 = vmatpush1.msra.mxu0 0.0
  %1877 = vmatprep.subr.mxu0 0.0
  %1878 = vmatpush1.msra.mxu0 0.0
  %1879 = vmatprep.subr.mxu0 0.0
  %1880 = vmatpush1.msra.mxu0 0.0
  %1881 = vmatprep.mubr.f32.mxu0 0.0
  %1882 = vmatmul.mubr.f32.gmra.mrb[0].mxu0 %v1668
  %v1883 = vpop.f32.mrb[0].mxu0
  %v1884 = vadd.f32 0.0, %v1883
  %v1885 = vpop.f32.mrb[0].mxu0
  %v1886 = vadd.f32 0.0, %v1885
  %1887 = vdwg.mxu0
  %1888 = vmatprep.subr.mxu0 %v1680
  %1889 = vmatpush1.msra.mxu0 %v1678
  %1890 = vmatprep.subr.mxu0 0.0
  %1891 = vmatpush1.msra.mxu0 0.0
  %1892 = vmatprep.subr.mxu0 0.0
  %1893 = vmatpush1.msra.mxu0 0.0
  %1894 = vmatprep.subr.mxu0 0.0
  %1895 = vmatpush1.msra.mxu0 0.0
  %1896 = vmatprep.subr.mxu0 0.0
  %1897 = vmatpush1.msra.mxu0 0.0
  %1898 = vmatprep.subr.mxu0 0.0
  %1899 = vmatpush1.msra.mxu0 0.0
  %1900 = vmatprep.subr.mxu0 0.0
  %1901 = vmatpush1.msra.mxu0 0.0
  %1902 = vmatprep.subr.mxu0 0.0
  %1903 = vmatpush1.msra.mxu0 0.0
  %1904 = vmatprep.subr.mxu0 0.0
  %1905 = vmatpush1.msra.mxu0 0.0
  %1906 = vmatprep.subr.mxu0 0.0
  %1907 = vmatpush1.msra.mxu0 0.0
  %1908 = vmatprep.subr.mxu0 0.0
  %1909 = vmatpush1.msra.mxu0 0.0
  %1910 = vmatprep.subr.mxu0 0.0
  %1911 = vmatpush1.msra.mxu0 0.0
  %1912 = vmatprep.subr.mxu0 0.0
  %1913 = vmatpush1.msra.mxu0 0.0
  %1914 = vmatprep.subr.mxu0 0.0
  %1915 = vmatpush1.msra.mxu0 0.0
  %1916 = vmatprep.subr.mxu0 0.0
  %1917 = vmatpush1.msra.mxu0 0.0
  %1918 = vmatprep.subr.mxu0 0.0
  %1919 = vmatpush1.msra.mxu0 0.0
  %1920 = vmatprep.subr.mxu0 0.0
  %1921 = vmatpush1.msra.mxu0 0.0
  %1922 = vmatprep.subr.mxu0 0.0
  %1923 = vmatpush1.msra.mxu0 0.0
  %1924 = vmatprep.subr.mxu0 0.0
  %1925 = vmatpush1.msra.mxu0 0.0
  %1926 = vmatprep.subr.mxu0 0.0
  %1927 = vmatpush1.msra.mxu0 0.0
  %1928 = vmatprep.subr.mxu0 0.0
  %1929 = vmatpush1.msra.mxu0 0.0
  %1930 = vmatprep.subr.mxu0 0.0
  %1931 = vmatpush1.msra.mxu0 0.0
  %1932 = vmatprep.subr.mxu0 0.0
  %1933 = vmatpush1.msra.mxu0 0.0
  %1934 = vmatprep.subr.mxu0 0.0
  %1935 = vmatpush1.msra.mxu0 0.0
  %1936 = vmatprep.subr.mxu0 0.0
  %1937 = vmatpush1.msra.mxu0 0.0
  %1938 = vmatprep.subr.mxu0 0.0
  %1939 = vmatpush1.msra.mxu0 0.0
  %1940 = vmatprep.subr.mxu0 0.0
  %1941 = vmatpush1.msra.mxu0 0.0
  %1942 = vmatprep.subr.mxu0 0.0
  %1943 = vmatpush1.msra.mxu0 0.0
  %1944 = vmatprep.subr.mxu0 0.0
  %1945 = vmatpush1.msra.mxu0 0.0
  %1946 = vmatprep.subr.mxu0 0.0
  %1947 = vmatpush1.msra.mxu0 0.0
  %1948 = vmatprep.subr.mxu0 0.0
  %1949 = vmatpush1.msra.mxu0 0.0
  %1950 = vmatprep.subr.mxu0 0.0
  %1951 = vmatpush1.msra.mxu0 0.0
  %1952 = vmatprep.mubr.f32.mxu0 0.0
  %1953 = vmatmul.mubr.f32.gmra.mrb[0].mxu0 %v1668
  %v1954 = vpop.f32.mrb[0].mxu0
  %v1955 = vadd.f32 0.0, %v1954
  %v1956 = vpop.f32.mrb[0].mxu0
  %v1957 = vadd.f32 0.0, %v1956
  %1958 = vdwg.mxu0
  %1959 = vmatprep.subr.mxu0 %v1684
  %1960 = vmatpush1.msra.mxu0 %v1682
  %1961 = vmatprep.subr.mxu0 0.0
  %1962 = vmatpush1.msra.mxu0 0.0
  %1963 = vmatprep.subr.mxu0 0.0
  %1964 = vmatpush1.msra.mxu0 0.0
  %1965 = vmatprep.subr.mxu0 0.0
  %1966 = vmatpush1.msra.mxu0 0.0
  %1967 = vmatprep.subr.mxu0 0.0
  %1968 = vmatpush1.msra.mxu0 0.0
  %1969 = vmatprep.subr.mxu0 0.0
  %1970 = vmatpush1.msra.mxu0 0.0
  %1971 = vmatprep.subr.mxu0 0.0
  %1972 = vmatpush1.msra.mxu0 0.0
  %1973 = vmatprep.subr.mxu0 0.0
  %1974 = vmatpush1.msra.mxu0 0.0
  %1975 = vmatprep.subr.mxu0 0.0
  %1976 = vmatpush1.msra.mxu0 0.0
  %1977 = vmatprep.subr.mxu0 0.0
  %1978 = vmatpush1.msra.mxu0 0.0
  %1979 = vmatprep.subr.mxu0 0.0
  %1980 = vmatpush1.msra.mxu0 0.0
  %1981 = vmatprep.subr.mxu0 0.0
  %1982 = vmatpush1.msra.mxu0 0.0
  %1983 = vmatprep.subr.mxu0 0.0
  %1984 = vmatpush1.msra.mxu0 0.0
  %1985 = vmatprep.subr.mxu0 0.0
  %1986 = vmatpush1.msra.mxu0 0.0
  %1987 = vmatprep.subr.mxu0 0.0
  %1988 = vmatpush1.msra.mxu0 0.0
  %1989 = vmatprep.subr.mxu0 0.0
  %1990 = vmatpush1.msra.mxu0 0.0
  %1991 = vmatprep.subr.mxu0 0.0
  %1992 = vmatpush1.msra.mxu0 0.0
  %1993 = vmatprep.subr.mxu0 0.0
  %1994 = vmatpush1.msra.mxu0 0.0
  %1995 = vmatprep.subr.mxu0 0.0
  %1996 = vmatpush1.msra.mxu0 0.0
  %1997 = vmatprep.subr.mxu0 0.0
  %1998 = vmatpush1.msra.mxu0 0.0
  %1999 = vmatprep.subr.mxu0 0.0
  %2000 = vmatpush1.msra.mxu0 0.0
  %2001 = vmatprep.subr.mxu0 0.0
  %2002 = vmatpush1.msra.mxu0 0.0
  %2003 = vmatprep.subr.mxu0 0.0
  %2004 = vmatpush1.msra.mxu0 0.0
  %2005 = vmatprep.subr.mxu0 0.0
  %2006 = vmatpush1.msra.mxu0 0.0
  %2007 = vmatprep.subr.mxu0 0.0
  %2008 = vmatpush1.msra.mxu0 0.0
  %2009 = vmatprep.subr.mxu0 0.0
  %2010 = vmatpush1.msra.mxu0 0.0
  %2011 = vmatprep.subr.mxu0 0.0
  %2012 = vmatpush1.msra.mxu0 0.0
  %2013 = vmatprep.subr.mxu0 0.0
  %2014 = vmatpush1.msra.mxu0 0.0
  %2015 = vmatprep.subr.mxu0 0.0
  %2016 = vmatpush1.msra.mxu0 0.0
  %2017 = vmatprep.subr.mxu0 0.0
  %2018 = vmatpush1.msra.mxu0 0.0
  %2019 = vmatprep.subr.mxu0 0.0
  %2020 = vmatpush1.msra.mxu0 0.0
  %2021 = vmatprep.subr.mxu0 0.0
  %2022 = vmatpush1.msra.mxu0 0.0
  %2023 = vmatprep.mubr.f32.mxu0 0.0
  %2024 = vmatmul.mubr.f32.gmra.mrb[0].mxu0 %v1668
  %v2025 = vpop.f32.mrb[0].mxu0
  %v2026 = vadd.f32 0.0, %v2025
  %v2027 = vpop.f32.mrb[0].mxu0
  %v2028 = vadd.f32 0.0, %v2027
  %2029 = vdwg.mxu0
  %2030 = vmatprep.subr.mxu0 %v1688
  %2031 = vmatpush1.msra.mxu0 %v1686
  %2032 = vmatprep.subr.mxu0 0.0
  %2033 = vmatpush1.msra.mxu0 0.0
  %2034 = vmatprep.subr.mxu0 0.0
  %2035 = vmatpush1.msra.mxu0 0.0
  %2036 = vmatprep.subr.mxu0 0.0
  %2037 = vmatpush1.msra.mxu0 0.0
  %2038 = vmatprep.subr.mxu0 0.0
  %2039 = vmatpush1.msra.mxu0 0.0
  %2040 = vmatprep.subr.mxu0 0.0
  %2041 = vmatpush1.msra.mxu0 0.0
  %2042 = vmatprep.subr.mxu0 0.0
  %2043 = vmatpush1.msra.mxu0 0.0
  %2044 = vmatprep.subr.mxu0 0.0
  %2045 = vmatpush1.msra.mxu0 0.0
  %2046 = vmatprep.subr.mxu0 0.0
  %2047 = vmatpush1.msra.mxu0 0.0
  %2048 = vmatprep.subr.mxu0 0.0
  %2049 = vmatpush1.msra.mxu0 0.0
  %2050 = vmatprep.subr.mxu0 0.0
  %2051 = vmatpush1.msra.mxu0 0.0
  %2052 = vmatprep.subr.mxu0 0.0
  %2053 = vmatpush1.msra.mxu0 0.0
  %2054 = vmatprep.subr.mxu0 0.0
  %2055 = vmatpush1.msra.mxu0 0.0
  %2056 = vmatprep.subr.mxu0 0.0
  %2057 = vmatpush1.msra.mxu0 0.0
  %2058 = vmatprep.subr.mxu0 0.0
  %2059 = vmatpush1.msra.mxu0 0.0
  %2060 = vmatprep.subr.mxu0 0.0
  %2061 = vmatpush1.msra.mxu0 0.0
  %2062 = vmatprep.subr.mxu0 0.0
  %2063 = vmatpush1.msra.mxu0 0.0
  %2064 = vmatprep.subr.mxu0 0.0
  %2065 = vmatpush1.msra.mxu0 0.0
  %2066 = vmatprep.subr.mxu0 0.0
  %2067 = vmatpush1.msra.mxu0 0.0
  %2068 = vmatprep.subr.mxu0 0.0
  %2069 = vmatpush1.msra.mxu0 0.0
  %2070 = vmatprep.subr.mxu0 0.0
  %2071 = vmatpush1.msra.mxu0 0.0
  %2072 = vmatprep.subr.mxu0 0.0
  %2073 = vmatpush1.msra.mxu0 0.0
  %2074 = vmatprep.subr.mxu0 0.0
  %2075 = vmatpush1.msra.mxu0 0.0
  %2076 = vmatprep.subr.mxu0 0.0
  %2077 = vmatpush1.msra.mxu0 0.0
  %2078 = vmatprep.subr.mxu0 0.0
  %2079 = vmatpush1.msra.mxu0 0.0
  %2080 = vmatprep.subr.mxu0 0.0
  %2081 = vmatpush1.msra.mxu0 0.0
  %2082 = vmatprep.subr.mxu0 0.0
  %2083 = vmatpush1.msra.mxu0 0.0
  %2084 = vmatprep.subr.mxu0 0.0
  %2085 = vmatpush1.msra.mxu0 0.0
  %2086 = vmatprep.subr.mxu0 0.0
  %2087 = vmatpush1.msra.mxu0 0.0
  %2088 = vmatprep.subr.mxu0 0.0
  %2089 = vmatpush1.msra.mxu0 0.0
  %2090 = vmatprep.subr.mxu0 0.0
  %2091 = vmatpush1.msra.mxu0 0.0
  %2092 = vmatprep.subr.mxu0 0.0
  %2093 = vmatpush1.msra.mxu0 0.0
  %2094 = vmatprep.mubr.f32.mxu0 0.0
  %2095 = vmatmul.mubr.f32.gmra.mrb[0].mxu0 %v1668
  %v2096 = vpop.f32.mrb[0].mxu0
  %v2097 = vadd.f32 0.0, %v2096
  %v2098 = vpop.f32.mrb[0].mxu0
  %v2099 = vadd.f32 0.0, %v2098
  %2100 = vdwg.mxu0
  %2101 = vmatprep.subr.mxu0 %v1692
  %2102 = vmatpush1.msra.mxu0 %v1690
  %2103 = vmatprep.subr.mxu0 0.0
  %2104 = vmatpush1.msra.mxu0 0.0
  %2105 = vmatprep.subr.mxu0 0.0
  %2106 = vmatpush1.msra.mxu0 0.0
  %2107 = vmatprep.subr.mxu0 0.0
  %2108 = vmatpush1.msra.mxu0 0.0
  %2109 = vmatprep.subr.mxu0 0.0
  %2110 = vmatpush1.msra.mxu0 0.0
  %2111 = vmatprep.subr.mxu0 0.0
  %2112 = vmatpush1.msra.mxu0 0.0
  %2113 = vmatprep.subr.mxu0 0.0
  %2114 = vmatpush1.msra.mxu0 0.0
  %2115 = vmatprep.subr.mxu0 0.0
  %2116 = vmatpush1.msra.mxu0 0.0
  %2117 = vmatprep.subr.mxu0 0.0
  %2118 = vmatpush1.msra.mxu0 0.0
  %2119 = vmatprep.subr.mxu0 0.0
  %2120 = vmatpush1.msra.mxu0 0.0
  %2121 = vmatprep.subr.mxu0 0.0
  %2122 = vmatpush1.msra.mxu0 0.0
  %2123 = vmatprep.subr.mxu0 0.0
  %2124 = vmatpush1.msra.mxu0 0.0
  %2125 = vmatprep.subr.mxu0 0.0
  %2126 = vmatpush1.msra.mxu0 0.0
  %2127 = vmatprep.subr.mxu0 0.0
  %2128 = vmatpush1.msra.mxu0 0.0
  %2129 = vmatprep.subr.mxu0 0.0
  %2130 = vmatpush1.msra.mxu0 0.0
  %2131 = vmatprep.subr.mxu0 0.0
  %2132 = vmatpush1.msra.mxu0 0.0
  %2133 = vmatprep.subr.mxu0 0.0
  %2134 = vmatpush1.msra.mxu0 0.0
  %2135 = vmatprep.subr.mxu0 0.0
  %2136 = vmatpush1.msra.mxu0 0.0
  %2137 = vmatprep.subr.mxu0 0.0
  %2138 = vmatpush1.msra.mxu0 0.0
  %2139 = vmatprep.subr.mxu0 0.0
  %2140 = vmatpush1.msra.mxu0 0.0
  %2141 = vmatprep.subr.mxu0 0.0
  %2142 = vmatpush1.msra.mxu0 0.0
  %2143 = vmatprep.subr.mxu0 0.0
  %2144 = vmatpush1.msra.mxu0 0.0
  %2145 = vmatprep.subr.mxu0 0.0
  %2146 = vmatpush1.msra.mxu0 0.0
  %2147 = vmatprep.subr.mxu0 0.0
  %2148 = vmatpush1.msra.mxu0 0.0
  %2149 = vmatprep.subr.mxu0 0.0
  %2150 = vmatpush1.msra.mxu0 0.0
  %2151 = vmatprep.subr.mxu0 0.0
  %2152 = vmatpush1.msra.mxu0 0.0
  %2153 = vmatprep.subr.mxu0 0.0
  %2154 = vmatpush1.msra.mxu0 0.0
  %2155 = vmatprep.subr.mxu0 0.0
  %2156 = vmatpush1.msra.mxu0 0.0
  %2157 = vmatprep.subr.mxu0 0.0
  %2158 = vmatpush1.msra.mxu0 0.0
  %2159 = vmatprep.subr.mxu0 0.0
  %2160 = vmatpush1.msra.mxu0 0.0
  %2161 = vmatprep.subr.mxu0 0.0
  %2162 = vmatpush1.msra.mxu0 0.0
  %2163 = vmatprep.subr.mxu0 0.0
  %2164 = vmatpush1.msra.mxu0 0.0
  %2165 = vmatprep.mubr.f32.mxu0 0.0
  %2166 = vmatmul.mubr.f32.gmra.mrb[0].mxu0 %v1668
  %v2167 = vpop.f32.mrb[0].mxu0
  %v2168 = vadd.f32 0.0, %v2167
  %v2169 = vpop.f32.mrb[0].mxu0
  %v2170 = vadd.f32 0.0, %v2169
  %2171 = vdwg.mxu0
  %2172 = vmatprep.subr.mxu0 %v1696
  %2173 = vmatpush1.msra.mxu0 %v1694
  %2174 = vmatprep.subr.mxu0 0.0
  %2175 = vmatpush1.msra.mxu0 0.0
  %2176 = vmatprep.subr.mxu0 0.0
  %2177 = vmatpush1.msra.mxu0 0.0
  %2178 = vmatprep.subr.mxu0 0.0
  %2179 = vmatpush1.msra.mxu0 0.0
  %2180 = vmatprep.subr.mxu0 0.0
  %2181 = vmatpush1.msra.mxu0 0.0
  %2182 = vmatprep.subr.mxu0 0.0
  %2183 = vmatpush1.msra.mxu0 0.0
  %2184 = vmatprep.subr.mxu0 0.0
  %2185 = vmatpush1.msra.mxu0 0.0
  %2186 = vmatprep.subr.mxu0 0.0
  %2187 = vmatpush1.msra.mxu0 0.0
  %2188 = vmatprep.subr.mxu0 0.0
  %2189 = vmatpush1.msra.mxu0 0.0
  %2190 = vmatprep.subr.mxu0 0.0
  %2191 = vmatpush1.msra.mxu0 0.0
  %2192 = vmatprep.subr.mxu0 0.0
  %2193 = vmatpush1.msra.mxu0 0.0
  %2194 = vmatprep.subr.mxu0 0.0
  %2195 = vmatpush1.msra.mxu0 0.0
  %2196 = vmatprep.subr.mxu0 0.0
  %2197 = vmatpush1.msra.mxu0 0.0
  %2198 = vmatprep.subr.mxu0 0.0
  %2199 = vmatpush1.msra.mxu0 0.0
  %2200 = vmatprep.subr.mxu0 0.0
  %2201 = vmatpush1.msra.mxu0 0.0
  %2202 = vmatprep.subr.mxu0 0.0
  %2203 = vmatpush1.msra.mxu0 0.0
  %2204 = vmatprep.subr.mxu0 0.0
  %2205 = vmatpush1.msra.mxu0 0.0
  %2206 = vmatprep.subr.mxu0 0.0
  %2207 = vmatpush1.msra.mxu0 0.0
  %2208 = vmatprep.subr.mxu0 0.0
  %2209 = vmatpush1.msra.mxu0 0.0
  %2210 = vmatprep.subr.mxu0 0.0
  %2211 = vmatpush1.msra.mxu0 0.0
  %2212 = vmatprep.subr.mxu0 0.0
  %2213 = vmatpush1.msra.mxu0 0.0
  %2214 = vmatprep.subr.mxu0 0.0
  %2215 = vmatpush1.msra.mxu0 0.0
  %2216 = vmatprep.subr.mxu0 0.0
  %2217 = vmatpush1.msra.mxu0 0.0
  %2218 = vmatprep.subr.mxu0 0.0
  %2219 = vmatpush1.msra.mxu0 0.0
  %2220 = vmatprep.subr.mxu0 0.0
  %2221 = vmatpush1.msra.mxu0 0.0
  %2222 = vmatprep.subr.mxu0 0.0
  %2223 = vmatpush1.msra.mxu0 0.0
  %2224 = vmatprep.subr.mxu0 0.0
  %2225 = vmatpush1.msra.mxu0 0.0
  %2226 = vmatprep.subr.mxu0 0.0
  %2227 = vmatpush1.msra.mxu0 0.0
  %2228 = vmatprep.subr.mxu0 0.0
  %2229 = vmatpush1.msra.mxu0 0.0
  %2230 = vmatprep.subr.mxu0 0.0
  %2231 = vmatpush1.msra.mxu0 0.0
  %2232 = vmatprep.subr.mxu0 0.0
  %2233 = vmatpush1.msra.mxu0 0.0
  %2234 = vmatprep.subr.mxu0 0.0
  %2235 = vmatpush1.msra.mxu0 0.0
  %2236 = vmatprep.mubr.f32.mxu0 0.0
  %2237 = vmatmul.mubr.f32.gmra.mrb[0].mxu0 %v1668
  %v2238 = vpop.f32.mrb[0].mxu0
  %v2239 = vadd.f32 0.0, %v2238
  %v2240 = vpop.f32.mrb[0].mxu0
  %v2241 = vadd.f32 0.0, %v2240
  %2242 = vdwg.mxu0
  %2243 = vmatprep.subr.mxu0 %v1700
  %2244 = vmatpush1.msra.mxu0 %v1698
  %2245 = vmatprep.subr.mxu0 0.0
  %2246 = vmatpush1.msra.mxu0 0.0
  %2247 = vmatprep.subr.mxu0 0.0
  %2248 = vmatpush1.msra.mxu0 0.0
  %2249 = vmatprep.subr.mxu0 0.0
  %2250 = vmatpush1.msra.mxu0 0.0
  %2251 = vmatprep.subr.mxu0 0.0
  %2252 = vmatpush1.msra.mxu0 0.0
  %2253 = vmatprep.subr.mxu0 0.0
  %2254 = vmatpush1.msra.mxu0 0.0
  %2255 = vmatprep.subr.mxu0 0.0
  %2256 = vmatpush1.msra.mxu0 0.0
  %2257 = vmatprep.subr.mxu0 0.0
  %2258 = vmatpush1.msra.mxu0 0.0
  %2259 = vmatprep.subr.mxu0 0.0
  %2260 = vmatpush1.msra.mxu0 0.0
  %2261 = vmatprep.subr.mxu0 0.0
  %2262 = vmatpush1.msra.mxu0 0.0
  %2263 = vmatprep.subr.mxu0 0.0
  %2264 = vmatpush1.msra.mxu0 0.0
  %2265 = vmatprep.subr.mxu0 0.0
  %2266 = vmatpush1.msra.mxu0 0.0
  %2267 = vmatprep.subr.mxu0 0.0
  %2268 = vmatpush1.msra.mxu0 0.0
  %2269 = vmatprep.subr.mxu0 0.0
  %2270 = vmatpush1.msra.mxu0 0.0
  %2271 = vmatprep.subr.mxu0 0.0
  %2272 = vmatpush1.msra.mxu0 0.0
  %2273 = vmatprep.subr.mxu0 0.0
  %2274 = vmatpush1.msra.mxu0 0.0
  %2275 = vmatprep.subr.mxu0 0.0
  %2276 = vmatpush1.msra.mxu0 0.0
  %2277 = vmatprep.subr.mxu0 0.0
  %2278 = vmatpush1.msra.mxu0 0.0
  %2279 = vmatprep.subr.mxu0 0.0
  %2280 = vmatpush1.msra.mxu0 0.0
  %2281 = vmatprep.subr.mxu0 0.0
  %2282 = vmatpush1.msra.mxu0 0.0
  %2283 = vmatprep.subr.mxu0 0.0
  %2284 = vmatpush1.msra.mxu0 0.0
  %2285 = vmatprep.subr.mxu0 0.0
  %2286 = vmatpush1.msra.mxu0 0.0
  %2287 = vmatprep.subr.mxu0 0.0
  %2288 = vmatpush1.msra.mxu0 0.0
  %2289 = vmatprep.subr.mxu0 0.0
  %2290 = vmatpush1.msra.mxu0 0.0
  %2291 = vmatprep.subr.mxu0 0.0
  %2292 = vmatpush1.msra.mxu0 0.0
  %2293 = vmatprep.subr.mxu0 0.0
  %2294 = vmatpush1.msra.mxu0 0.0
  %2295 = vmatprep.subr.mxu0 0.0
  %2296 = vmatpush1.msra.mxu0 0.0
  %2297 = vmatprep.subr.mxu0 0.0
  %2298 = vmatpush1.msra.mxu0 0.0
  %2299 = vmatprep.subr.mxu0 0.0
  %2300 = vmatpush1.msra.mxu0 0.0
  %2301 = vmatprep.subr.mxu0 0.0
  %2302 = vmatpush1.msra.mxu0 0.0
  %2303 = vmatprep.subr.mxu0 0.0
  %2304 = vmatpush1.msra.mxu0 0.0
  %2305 = vmatprep.subr.mxu0 0.0
  %2306 = vmatpush1.msra.mxu0 0.0
  %2307 = vmatprep.mubr.f32.mxu0 0.0
  %2308 = vmatmul.mubr.f32.gmra.mrb[0].mxu0 %v1668
  %v2309 = vpop.f32.mrb[0].mxu0
  %v2310 = vadd.f32 0.0, %v2309
  %v2311 = vpop.f32.mrb[0].mxu0
  %v2312 = vadd.f32 0.0, %v2311
  %2313 = vdwg.mxu0
  %2314 = vmatprep.subr.mxu0 %v1704
  %2315 = vmatpush1.msra.mxu0 %v1702
  %2316 = vmatprep.subr.mxu0 0.0
  %2317 = vmatpush1.msra.mxu0 0.0
  %2318 = vmatprep.subr.mxu0 0.0
  %2319 = vmatpush1.msra.mxu0 0.0
  %2320 = vmatprep.subr.mxu0 0.0
  %2321 = vmatpush1.msra.mxu0 0.0
  %2322 = vmatprep.subr.mxu0 0.0
  %2323 = vmatpush1.msra.mxu0 0.0
  %2324 = vmatprep.subr.mxu0 0.0
  %2325 = vmatpush1.msra.mxu0 0.0
  %2326 = vmatprep.subr.mxu0 0.0
  %2327 = vmatpush1.msra.mxu0 0.0
  %2328 = vmatprep.subr.mxu0 0.0
  %2329 = vmatpush1.msra.mxu0 0.0
  %2330 = vmatprep.subr.mxu0 0.0
  %2331 = vmatpush1.msra.mxu0 0.0
  %2332 = vmatprep.subr.mxu0 0.0
  %2333 = vmatpush1.msra.mxu0 0.0
  %2334 = vmatprep.subr.mxu0 0.0
  %2335 = vmatpush1.msra.mxu0 0.0
  %2336 = vmatprep.subr.mxu0 0.0
  %2337 = vmatpush1.msra.mxu0 0.0
  %2338 = vmatprep.subr.mxu0 0.0
  %2339 = vmatpush1.msra.mxu0 0.0
  %2340 = vmatprep.subr.mxu0 0.0
  %2341 = vmatpush1.msra.mxu0 0.0
  %2342 = vmatprep.subr.mxu0 0.0
  %2343 = vmatpush1.msra.mxu0 0.0
  %2344 = vmatprep.subr.mxu0 0.0
  %2345 = vmatpush1.msra.mxu0 0.0
  %2346 = vmatprep.subr.mxu0 0.0
  %2347 = vmatpush1.msra.mxu0 0.0
  %2348 = vmatprep.subr.mxu0 0.0
  %2349 = vmatpush1.msra.mxu0 0.0
  %2350 = vmatprep.subr.mxu0 0.0
  %2351 = vmatpush1.msra.mxu0 0.0
  %2352 = vmatprep.subr.mxu0 0.0
  %2353 = vmatpush1.msra.mxu0 0.0
  %2354 = vmatprep.subr.mxu0 0.0
  %2355 = vmatpush1.msra.mxu0 0.0
  %2356 = vmatprep.subr.mxu0 0.0
  %2357 = vmatpush1.msra.mxu0 0.0
  %2358 = vmatprep.subr.mxu0 0.0
  %2359 = vmatpush1.msra.mxu0 0.0
  %2360 = vmatprep.subr.mxu0 0.0
  %2361 = vmatpush1.msra.mxu0 0.0
  %2362 = vmatprep.subr.mxu0 0.0
  %2363 = vmatpush1.msra.mxu0 0.0
  %2364 = vmatprep.subr.mxu0 0.0
  %2365 = vmatpush1.msra.mxu0 0.0
  %2366 = vmatprep.subr.mxu0 0.0
  %2367 = vmatpush1.msra.mxu0 0.0
  %2368 = vmatprep.subr.mxu0 0.0
  %2369 = vmatpush1.msra.mxu0 0.0
  %2370 = vmatprep.subr.mxu0 0.0
  %2371 = vmatpush1.msra.mxu0 0.0
  %2372 = vmatprep.subr.mxu0 0.0
  %2373 = vmatpush1.msra.mxu0 0.0
  %2374 = vmatprep.subr.mxu0 0.0
  %2375 = vmatpush1.msra.mxu0 0.0
  %2376 = vmatprep.subr.mxu0 0.0
  %2377 = vmatpush1.msra.mxu0 0.0
  %2378 = vmatprep.mubr.f32.mxu0 0.0
  %2379 = vmatmul.mubr.f32.gmra.mrb[0].mxu0 %v1668
  %v2380 = vpop.f32.mrb[0].mxu0
  %v2381 = vadd.f32 0.0, %v2380
  %v2382 = vpop.f32.mrb[0].mxu0
  %v2383 = vadd.f32 0.0, %v2382
  %2384 = vdwg.mxu0
  %2385 = vmatprep.subr.mxu0 %v1708
  %2386 = vmatpush1.msra.mxu0 %v1706
  %2387 = vmatprep.subr.mxu0 0.0
  %2388 = vmatpush1.msra.mxu0 0.0
  %2389 = vmatprep.subr.mxu0 0.0
  %2390 = vmatpush1.msra.mxu0 0.0
  %2391 = vmatprep.subr.mxu0 0.0
  %2392 = vmatpush1.msra.mxu0 0.0
  %2393 = vmatprep.subr.mxu0 0.0
  %2394 = vmatpush1.msra.mxu0 0.0
  %2395 = vmatprep.subr.mxu0 0.0
  %2396 = vmatpush1.msra.mxu0 0.0
  %2397 = vmatprep.subr.mxu0 0.0
  %2398 = vmatpush1.msra.mxu0 0.0
  %2399 = vmatprep.subr.mxu0 0.0
  %2400 = vmatpush1.msra.mxu0 0.0
  %2401 = vmatprep.subr.mxu0 0.0
  %2402 = vmatpush1.msra.mxu0 0.0
  %2403 = vmatprep.subr.mxu0 0.0
  %2404 = vmatpush1.msra.mxu0 0.0
  %2405 = vmatprep.subr.mxu0 0.0
  %2406 = vmatpush1.msra.mxu0 0.0
  %2407 = vmatprep.subr.mxu0 0.0
  %2408 = vmatpush1.msra.mxu0 0.0
  %2409 = vmatprep.subr.mxu0 0.0
  %2410 = vmatpush1.msra.mxu0 0.0
  %2411 = vmatprep.subr.mxu0 0.0
  %2412 = vmatpush1.msra.mxu0 0.0
  %2413 = vmatprep.subr.mxu0 0.0
  %2414 = vmatpush1.msra.mxu0 0.0
  %2415 = vmatprep.subr.mxu0 0.0
  %2416 = vmatpush1.msra.mxu0 0.0
  %2417 = vmatprep.subr.mxu0 0.0
  %2418 = vmatpush1.msra.mxu0 0.0
  %2419 = vmatprep.subr.mxu0 0.0
  %2420 = vmatpush1.msra.mxu0 0.0
  %2421 = vmatprep.subr.mxu0 0.0
  %2422 = vmatpush1.msra.mxu0 0.0
  %2423 = vmatprep.subr.mxu0 0.0
  %2424 = vmatpush1.msra.mxu0 0.0
  %2425 = vmatprep.subr.mxu0 0.0
  %2426 = vmatpush1.msra.mxu0 0.0
  %2427 = vmatprep.subr.mxu0 0.0
  %2428 = vmatpush1.msra.mxu0 0.0
  %2429 = vmatprep.subr.mxu0 0.0
  %2430 = vmatpush1.msra.mxu0 0.0
  %2431 = vmatprep.subr.mxu0 0.0
  %2432 = vmatpush1.msra.mxu0 0.0
  %2433 = vmatprep.subr.mxu0 0.0
  %2434 = vmatpush1.msra.mxu0 0.0
  %2435 = vmatprep.subr.mxu0 0.0
  %2436 = vmatpush1.msra.mxu0 0.0
  %2437 = vmatprep.subr.mxu0 0.0
  %2438 = vmatpush1.msra.mxu0 0.0
  %2439 = vmatprep.subr.mxu0 0.0
  %2440 = vmatpush1.msra.mxu0 0.0
  %2441 = vmatprep.subr.mxu0 0.0
  %2442 = vmatpush1.msra.mxu0 0.0
  %2443 = vmatprep.subr.mxu0 0.0
  %2444 = vmatpush1.msra.mxu0 0.0
  %2445 = vmatprep.subr.mxu0 0.0
  %2446 = vmatpush1.msra.mxu0 0.0
  %2447 = vmatprep.subr.mxu0 0.0
  %2448 = vmatpush1.msra.mxu0 0.0
  %2449 = vmatprep.mubr.f32.mxu0 0.0
  %2450 = vmatmul.mubr.f32.gmra.mrb[0].mxu0 %v1668
  %v2451 = vpop.f32.mrb[0].mxu0
  %v2452 = vadd.f32 0.0, %v2451
  %v2453 = vpop.f32.mrb[0].mxu0
  %v2454 = vadd.f32 0.0, %v2453
  %2455 = vdwg.mxu0
  %2456 = vmatprep.subr.mxu0 %v1712
  %2457 = vmatpush1.msra.mxu0 %v1710
  %2458 = vmatprep.subr.mxu0 0.0
  %2459 = vmatpush1.msra.mxu0 0.0
  %2460 = vmatprep.subr.mxu0 0.0
  %2461 = vmatpush1.msra.mxu0 0.0
  %2462 = vmatprep.subr.mxu0 0.0
  %2463 = vmatpush1.msra.mxu0 0.0
  %2464 = vmatprep.subr.mxu0 0.0
  %2465 = vmatpush1.msra.mxu0 0.0
  %2466 = vmatprep.subr.mxu0 0.0
  %2467 = vmatpush1.msra.mxu0 0.0
  %2468 = vmatprep.subr.mxu0 0.0
  %2469 = vmatpush1.msra.mxu0 0.0
  %2470 = vmatprep.subr.mxu0 0.0
  %2471 = vmatpush1.msra.mxu0 0.0
  %2472 = vmatprep.subr.mxu0 0.0
  %2473 = vmatpush1.msra.mxu0 0.0
  %2474 = vmatprep.subr.mxu0 0.0
  %2475 = vmatpush1.msra.mxu0 0.0
  %2476 = vmatprep.subr.mxu0 0.0
  %2477 = vmatpush1.msra.mxu0 0.0
  %2478 = vmatprep.subr.mxu0 0.0
  %2479 = vmatpush1.msra.mxu0 0.0
  %2480 = vmatprep.subr.mxu0 0.0
  %2481 = vmatpush1.msra.mxu0 0.0
  %2482 = vmatprep.subr.mxu0 0.0
  %2483 = vmatpush1.msra.mxu0 0.0
  %2484 = vmatprep.subr.mxu0 0.0
  %2485 = vmatpush1.msra.mxu0 0.0
  %2486 = vmatprep.subr.mxu0 0.0
  %2487 = vmatpush1.msra.mxu0 0.0
  %2488 = vmatprep.subr.mxu0 0.0
  %2489 = vmatpush1.msra.mxu0 0.0
  %2490 = vmatprep.subr.mxu0 0.0
  %2491 = vmatpush1.msra.mxu0 0.0
  %2492 = vmatprep.subr.mxu0 0.0
  %2493 = vmatpush1.msra.mxu0 0.0
  %2494 = vmatprep.subr.mxu0 0.0
  %2495 = vmatpush1.msra.mxu0 0.0
  %2496 = vmatprep.subr.mxu0 0.0
  %2497 = vmatpush1.msra.mxu0 0.0
  %2498 = vmatprep.subr.mxu0 0.0
  %2499 = vmatpush1.msra.mxu0 0.0
  %2500 = vmatprep.subr.mxu0 0.0
  %2501 = vmatpush1.msra.mxu0 0.0
  %2502 = vmatprep.subr.mxu0 0.0
  %2503 = vmatpush1.msra.mxu0 0.0
  %2504 = vmatprep.subr.mxu0 0.0
  %2505 = vmatpush1.msra.mxu0 0.0
  %2506 = vmatprep.subr.mxu0 0.0
  %2507 = vmatpush1.msra.mxu0 0.0
  %2508 = vmatprep.subr.mxu0 0.0
  %2509 = vmatpush1.msra.mxu0 0.0
  %2510 = vmatprep.subr.mxu0 0.0
  %2511 = vmatpush1.msra.mxu0 0.0
  %2512 = vmatprep.subr.mxu0 0.0
  %2513 = vmatpush1.msra.mxu0 0.0
  %2514 = vmatprep.subr.mxu0 0.0
  %2515 = vmatpush1.msra.mxu0 0.0
  %2516 = vmatprep.subr.mxu0 0.0
  %2517 = vmatpush1.msra.mxu0 0.0
  %2518 = vmatprep.subr.mxu0 0.0
  %2519 = vmatpush1.msra.mxu0 0.0
  %2520 = vmatprep.mubr.f32.mxu0 0.0
  %2521 = vmatmul.mubr.f32.gmra.mrb[0].mxu0 %v1668
  %v2522 = vpop.f32.mrb[0].mxu0
  %v2523 = vadd.f32 0.0, %v2522
  %v2524 = vpop.f32.mrb[0].mxu0
  %v2525 = vadd.f32 0.0, %v2524
  %2526 = vdwg.mxu0
  %2527 = vmatprep.subr.mxu0 %v1716
  %2528 = vmatpush1.msra.mxu0 %v1714
  %2529 = vmatprep.subr.mxu0 0.0
  %2530 = vmatpush1.msra.mxu0 0.0
  %2531 = vmatprep.subr.mxu0 0.0
  %2532 = vmatpush1.msra.mxu0 0.0
  %2533 = vmatprep.subr.mxu0 0.0
  %2534 = vmatpush1.msra.mxu0 0.0
  %2535 = vmatprep.subr.mxu0 0.0
  %2536 = vmatpush1.msra.mxu0 0.0
  %2537 = vmatprep.subr.mxu0 0.0
  %2538 = vmatpush1.msra.mxu0 0.0
  %2539 = vmatprep.subr.mxu0 0.0
  %2540 = vmatpush1.msra.mxu0 0.0
  %2541 = vmatprep.subr.mxu0 0.0
  %2542 = vmatpush1.msra.mxu0 0.0
  %2543 = vmatprep.subr.mxu0 0.0
  %2544 = vmatpush1.msra.mxu0 0.0
  %2545 = vmatprep.subr.mxu0 0.0
  %2546 = vmatpush1.msra.mxu0 0.0
  %2547 = vmatprep.subr.mxu0 0.0
  %2548 = vmatpush1.msra.mxu0 0.0
  %2549 = vmatprep.subr.mxu0 0.0
  %2550 = vmatpush1.msra.mxu0 0.0
  %2551 = vmatprep.subr.mxu0 0.0
  %2552 = vmatpush1.msra.mxu0 0.0
  %2553 = vmatprep.subr.mxu0 0.0
  %2554 = vmatpush1.msra.mxu0 0.0
  %2555 = vmatprep.subr.mxu0 0.0
  %2556 = vmatpush1.msra.mxu0 0.0
  %2557 = vmatprep.subr.mxu0 0.0
  %2558 = vmatpush1.msra.mxu0 0.0
  %2559 = vmatprep.subr.mxu0 0.0
  %2560 = vmatpush1.msra.mxu0 0.0
  %2561 = vmatprep.subr.mxu0 0.0
  %2562 = vmatpush1.msra.mxu0 0.0
  %2563 = vmatprep.subr.mxu0 0.0
  %2564 = vmatpush1.msra.mxu0 0.0
  %2565 = vmatprep.subr.mxu0 0.0
  %2566 = vmatpush1.msra.mxu0 0.0
  %2567 = vmatprep.subr.mxu0 0.0
  %2568 = vmatpush1.msra.mxu0 0.0
  %2569 = vmatprep.subr.mxu0 0.0
  %2570 = vmatpush1.msra.mxu0 0.0
  %2571 = vmatprep.subr.mxu0 0.0
  %2572 = vmatpush1.msra.mxu0 0.0
  %2573 = vmatprep.subr.mxu0 0.0
  %2574 = vmatpush1.msra.mxu0 0.0
  %2575 = vmatprep.subr.mxu0 0.0
  %2576 = vmatpush1.msra.mxu0 0.0
  %2577 = vmatprep.subr.mxu0 0.0
  %2578 = vmatpush1.msra.mxu0 0.0
  %2579 = vmatprep.subr.mxu0 0.0
  %2580 = vmatpush1.msra.mxu0 0.0
  %2581 = vmatprep.subr.mxu0 0.0
  %2582 = vmatpush1.msra.mxu0 0.0
  %2583 = vmatprep.subr.mxu0 0.0
  %2584 = vmatpush1.msra.mxu0 0.0
  %2585 = vmatprep.subr.mxu0 0.0
  %2586 = vmatpush1.msra.mxu0 0.0
  %2587 = vmatprep.subr.mxu0 0.0
  %2588 = vmatpush1.msra.mxu0 0.0
  %2589 = vmatprep.subr.mxu0 0.0
  %2590 = vmatpush1.msra.mxu0 0.0
  %2591 = vmatprep.mubr.f32.mxu0 0.0
  %2592 = vmatmul.mubr.f32.gmra.mrb[0].mxu0 %v1668
  %v2593 = vpop.f32.mrb[0].mxu0
  %v2594 = vadd.f32 0.0, %v2593
  %v2595 = vpop.f32.mrb[0].mxu0
  %v2596 = vadd.f32 0.0, %v2595
  %2597 = vdwg.mxu0
  %2598 = vmatprep.subr.mxu0 %v1720
  %2599 = vmatpush1.msra.mxu0 %v1718
  %2600 = vmatprep.subr.mxu0 0.0
  %2601 = vmatpush1.msra.mxu0 0.0
  %2602 = vmatprep.subr.mxu0 0.0
  %2603 = vmatpush1.msra.mxu0 0.0
  %2604 = vmatprep.subr.mxu0 0.0
  %2605 = vmatpush1.msra.mxu0 0.0
  %2606 = vmatprep.subr.mxu0 0.0
  %2607 = vmatpush1.msra.mxu0 0.0
  %2608 = vmatprep.subr.mxu0 0.0
  %2609 = vmatpush1.msra.mxu0 0.0
  %2610 = vmatprep.subr.mxu0 0.0
  %2611 = vmatpush1.msra.mxu0 0.0
  %2612 = vmatprep.subr.mxu0 0.0
  %2613 = vmatpush1.msra.mxu0 0.0
  %2614 = vmatprep.subr.mxu0 0.0
  %2615 = vmatpush1.msra.mxu0 0.0
  %2616 = vmatprep.subr.mxu0 0.0
  %2617 = vmatpush1.msra.mxu0 0.0
  %2618 = vmatprep.subr.mxu0 0.0
  %2619 = vmatpush1.msra.mxu0 0.0
  %2620 = vmatprep.subr.mxu0 0.0
  %2621 = vmatpush1.msra.mxu0 0.0
  %2622 = vmatprep.subr.mxu0 0.0
  %2623 = vmatpush1.msra.mxu0 0.0
  %2624 = vmatprep.subr.mxu0 0.0
  %2625 = vmatpush1.msra.mxu0 0.0
  %2626 = vmatprep.subr.mxu0 0.0
  %2627 = vmatpush1.msra.mxu0 0.0
  %2628 = vmatprep.subr.mxu0 0.0
  %2629 = vmatpush1.msra.mxu0 0.0
  %2630 = vmatprep.subr.mxu0 0.0
  %2631 = vmatpush1.msra.mxu0 0.0
  %2632 = vmatprep.subr.mxu0 0.0
  %2633 = vmatpush1.msra.mxu0 0.0
  %2634 = vmatprep.subr.mxu0 0.0
  %2635 = vmatpush1.msra.mxu0 0.0
  %2636 = vmatprep.subr.mxu0 0.0
  %2637 = vmatpush1.msra.mxu0 0.0
  %2638 = vmatprep.subr.mxu0 0.0
  %2639 = vmatpush1.msra.mxu0 0.0
  %2640 = vmatprep.subr.mxu0 0.0
  %2641 = vmatpush1.msra.mxu0 0.0
  %2642 = vmatprep.subr.mxu0 0.0
  %2643 = vmatpush1.msra.mxu0 0.0
  %2644 = vmatprep.subr.mxu0 0.0
  %2645 = vmatpush1.msra.mxu0 0.0
  %2646 = vmatprep.subr.mxu0 0.0
  %2647 = vmatpush1.msra.mxu0 0.0
  %2648 = vmatprep.subr.mxu0 0.0
  %2649 = vmatpush1.msra.mxu0 0.0
  %2650 = vmatprep.subr.mxu0 0.0
  %2651 = vmatpush1.msra.mxu0 0.0
  %2652 = vmatprep.subr.mxu0 0.0
  %2653 = vmatpush1.msra.mxu0 0.0
  %2654 = vmatprep.subr.mxu0 0.0
  %2655 = vmatpush1.msra.mxu0 0.0
  %2656 = vmatprep.subr.mxu0 0.0
  %2657 = vmatpush1.msra.mxu0 0.0
  %2658 = vmatprep.subr.mxu0 0.0
  %2659 = vmatpush1.msra.mxu0 0.0
  %2660 = vmatprep.subr.mxu0 0.0
  %2661 = vmatpush1.msra.mxu0 0.0
  %2662 = vmatprep.mubr.f32.mxu0 0.0
  %2663 = vmatmul.mubr.f32.gmra.mrb[0].mxu0 %v1668
  %v2664 = vpop.f32.mrb[0].mxu0
  %v2665 = vadd.f32 0.0, %v2664
  %v2666 = vpop.f32.mrb[0].mxu0
  %v2667 = vadd.f32 0.0, %v2666
  %2668 = vdwg.mxu0
  %2669 = vmatprep.subr.mxu0 %v1724
  %2670 = vmatpush1.msra.mxu0 %v1722
  %2671 = vmatprep.subr.mxu0 0.0
  %2672 = vmatpush1.msra.mxu0 0.0
  %2673 = vmatprep.subr.mxu0 0.0
  %2674 = vmatpush1.msra.mxu0 0.0
  %2675 = vmatprep.subr.mxu0 0.0
  %2676 = vmatpush1.msra.mxu0 0.0
  %2677 = vmatprep.subr.mxu0 0.0
  %2678 = vmatpush1.msra.mxu0 0.0
  %2679 = vmatprep.subr.mxu0 0.0
  %2680 = vmatpush1.msra.mxu0 0.0
  %2681 = vmatprep.subr.mxu0 0.0
  %2682 = vmatpush1.msra.mxu0 0.0
  %2683 = vmatprep.subr.mxu0 0.0
  %2684 = vmatpush1.msra.mxu0 0.0
  %2685 = vmatprep.subr.mxu0 0.0
  %2686 = vmatpush1.msra.mxu0 0.0
  %2687 = vmatprep.subr.mxu0 0.0
  %2688 = vmatpush1.msra.mxu0 0.0
  %2689 = vmatprep.subr.mxu0 0.0
  %2690 = vmatpush1.msra.mxu0 0.0
  %2691 = vmatprep.subr.mxu0 0.0
  %2692 = vmatpush1.msra.mxu0 0.0
  %2693 = vmatprep.subr.mxu0 0.0
  %2694 = vmatpush1.msra.mxu0 0.0
  %2695 = vmatprep.subr.mxu0 0.0
  %2696 = vmatpush1.msra.mxu0 0.0
  %2697 = vmatprep.subr.mxu0 0.0
  %2698 = vmatpush1.msra.mxu0 0.0
  %2699 = vmatprep.subr.mxu0 0.0
  %2700 = vmatpush1.msra.mxu0 0.0
  %2701 = vmatprep.subr.mxu0 0.0
  %2702 = vmatpush1.msra.mxu0 0.0
  %2703 = vmatprep.subr.mxu0 0.0
  %2704 = vmatpush1.msra.mxu0 0.0
  %2705 = vmatprep.subr.mxu0 0.0
  %2706 = vmatpush1.msra.mxu0 0.0
  %2707 = vmatprep.subr.mxu0 0.0
  %2708 = vmatpush1.msra.mxu0 0.0
  %2709 = vmatprep.subr.mxu0 0.0
  %2710 = vmatpush1.msra.mxu0 0.0
  %2711 = vmatprep.subr.mxu0 0.0
  %2712 = vmatpush1.msra.mxu0 0.0
  %2713 = vmatprep.subr.mxu0 0.0
  %2714 = vmatpush1.msra.mxu0 0.0
  %2715 = vmatprep.subr.mxu0 0.0
  %2716 = vmatpush1.msra.mxu0 0.0
  %2717 = vmatprep.subr.mxu0 0.0
  %2718 = vmatpush1.msra.mxu0 0.0
  %2719 = vmatprep.subr.mxu0 0.0
  %2720 = vmatpush1.msra.mxu0 0.0
  %2721 = vmatprep.subr.mxu0 0.0
  %2722 = vmatpush1.msra.mxu0 0.0
  %2723 = vmatprep.subr.mxu0 0.0
  %2724 = vmatpush1.msra.mxu0 0.0
  %2725 = vmatprep.subr.mxu0 0.0
  %2726 = vmatpush1.msra.mxu0 0.0
  %2727 = vmatprep.subr.mxu0 0.0
  %2728 = vmatpush1.msra.mxu0 0.0
  %2729 = vmatprep.subr.mxu0 0.0
  %2730 = vmatpush1.msra.mxu0 0.0
  %2731 = vmatprep.subr.mxu0 0.0
  %2732 = vmatpush1.msra.mxu0 0.0
  %2733 = vmatprep.mubr.f32.mxu0 0.0
  %2734 = vmatmul.mubr.f32.gmra.mrb[0].mxu0 %v1668
  %v2735 = vpop.f32.mrb[0].mxu0
  %v2736 = vadd.f32 0.0, %v2735
  %v2737 = vpop.f32.mrb[0].mxu0
  %v2738 = vadd.f32 0.0, %v2737
  %2739 = vdwg.mxu0
  %2740 = vmatprep.subr.mxu0 %v1728
  %2741 = vmatpush1.msra.mxu0 %v1726
  %2742 = vmatprep.subr.mxu0 0.0
  %2743 = vmatpush1.msra.mxu0 0.0
  %2744 = vmatprep.subr.mxu0 0.0
  %2745 = vmatpush1.msra.mxu0 0.0
  %2746 = vmatprep.subr.mxu0 0.0
  %2747 = vmatpush1.msra.mxu0 0.0
  %2748 = vmatprep.subr.mxu0 0.0
  %2749 = vmatpush1.msra.mxu0 0.0
  %2750 = vmatprep.subr.mxu0 0.0
  %2751 = vmatpush1.msra.mxu0 0.0
  %2752 = vmatprep.subr.mxu0 0.0
  %2753 = vmatpush1.msra.mxu0 0.0
  %2754 = vmatprep.subr.mxu0 0.0
  %2755 = vmatpush1.msra.mxu0 0.0
  %2756 = vmatprep.subr.mxu0 0.0
  %2757 = vmatpush1.msra.mxu0 0.0
  %2758 = vmatprep.subr.mxu0 0.0
  %2759 = vmatpush1.msra.mxu0 0.0
  %2760 = vmatprep.subr.mxu0 0.0
  %2761 = vmatpush1.msra.mxu0 0.0
  %2762 = vmatprep.subr.mxu0 0.0
  %2763 = vmatpush1.msra.mxu0 0.0
  %2764 = vmatprep.subr.mxu0 0.0
  %2765 = vmatpush1.msra.mxu0 0.0
  %2766 = vmatprep.subr.mxu0 0.0
  %2767 = vmatpush1.msra.mxu0 0.0
  %2768 = vmatprep.subr.mxu0 0.0
  %2769 = vmatpush1.msra.mxu0 0.0
  %2770 = vmatprep.subr.mxu0 0.0
  %2771 = vmatpush1.msra.mxu0 0.0
  %2772 = vmatprep.subr.mxu0 0.0
  %2773 = vmatpush1.msra.mxu0 0.0
  %2774 = vmatprep.subr.mxu0 0.0
  %2775 = vmatpush1.msra.mxu0 0.0
  %2776 = vmatprep.subr.mxu0 0.0
  %2777 = vmatpush1.msra.mxu0 0.0
  %2778 = vmatprep.subr.mxu0 0.0
  %2779 = vmatpush1.msra.mxu0 0.0
  %2780 = vmatprep.subr.mxu0 0.0
  %2781 = vmatpush1.msra.mxu0 0.0
  %2782 = vmatprep.subr.mxu0 0.0
  %2783 = vmatpush1.msra.mxu0 0.0
  %2784 = vmatprep.subr.mxu0 0.0
  %2785 = vmatpush1.msra.mxu0 0.0
  %2786 = vmatprep.subr.mxu0 0.0
  %2787 = vmatpush1.msra.mxu0 0.0
  %2788 = vmatprep.subr.mxu0 0.0
  %2789 = vmatpush1.msra.mxu0 0.0
  %2790 = vmatprep.subr.mxu0 0.0
  %2791 = vmatpush1.msra.mxu0 0.0
  %2792 = vmatprep.subr.mxu0 0.0
  %2793 = vmatpush1.msra.mxu0 0.0
  %2794 = vmatprep.subr.mxu0 0.0
  %2795 = vmatpush1.msra.mxu0 0.0
  %2796 = vmatprep.subr.mxu0 0.0
  %2797 = vmatpush1.msra.mxu0 0.0
  %2798 = vmatprep.subr.mxu0 0.0
  %2799 = vmatpush1.msra.mxu0 0.0
  %2800 = vmatprep.subr.mxu0 0.0
  %2801 = vmatpush1.msra.mxu0 0.0
  %2802 = vmatprep.subr.mxu0 0.0
  %2803 = vmatpush1.msra.mxu0 0.0
  %2804 = vmatprep.mubr.f32.mxu0 0.0
  %2805 = vmatmul.mubr.f32.gmra.mrb[0].mxu0 %v1668
  %v2806 = vpop.f32.mrb[0].mxu0
  %v2807 = vadd.f32 0.0, %v2806
  %v2808 = vpop.f32.mrb[0].mxu0
  %v2809 = vadd.f32 0.0, %v2808
  %2810 = vdwg.mxu0
  %2811 = vmatprep.subr.mxu0 %v1732
  %2812 = vmatpush1.msra.mxu0 %v1730
  %2813 = vmatprep.subr.mxu0 0.0
  %2814 = vmatpush1.msra.mxu0 0.0
  %2815 = vmatprep.subr.mxu0 0.0
  %2816 = vmatpush1.msra.mxu0 0.0
  %2817 = vmatprep.subr.mxu0 0.0
  %2818 = vmatpush1.msra.mxu0 0.0
  %2819 = vmatprep.subr.mxu0 0.0
  %2820 = vmatpush1.msra.mxu0 0.0
  %2821 = vmatprep.subr.mxu0 0.0
  %2822 = vmatpush1.msra.mxu0 0.0
  %2823 = vmatprep.subr.mxu0 0.0
  %2824 = vmatpush1.msra.mxu0 0.0
  %2825 = vmatprep.subr.mxu0 0.0
  %2826 = vmatpush1.msra.mxu0 0.0
  %2827 = vmatprep.subr.mxu0 0.0
  %2828 = vmatpush1.msra.mxu0 0.0
  %2829 = vmatprep.subr.mxu0 0.0
  %2830 = vmatpush1.msra.mxu0 0.0
  %2831 = vmatprep.subr.mxu0 0.0
  %2832 = vmatpush1.msra.mxu0 0.0
  %2833 = vmatprep.subr.mxu0 0.0
  %2834 = vmatpush1.msra.mxu0 0.0
  %2835 = vmatprep.subr.mxu0 0.0
  %2836 = vmatpush1.msra.mxu0 0.0
  %2837 = vmatprep.subr.mxu0 0.0
  %2838 = vmatpush1.msra.mxu0 0.0
  %2839 = vmatprep.subr.mxu0 0.0
  %2840 = vmatpush1.msra.mxu0 0.0
  %2841 = vmatprep.subr.mxu0 0.0
  %2842 = vmatpush1.msra.mxu0 0.0
  %2843 = vmatprep.subr.mxu0 0.0
  %2844 = vmatpush1.msra.mxu0 0.0
  %2845 = vmatprep.subr.mxu0 0.0
  %2846 = vmatpush1.msra.mxu0 0.0
  %2847 = vmatprep.subr.mxu0 0.0
  %2848 = vmatpush1.msra.mxu0 0.0
  %2849 = vmatprep.subr.mxu0 0.0
  %2850 = vmatpush1.msra.mxu0 0.0
  %2851 = vmatprep.subr.mxu0 0.0
  %2852 = vmatpush1.msra.mxu0 0.0
  %2853 = vmatprep.subr.mxu0 0.0
  %2854 = vmatpush1.msra.mxu0 0.0
  %2855 = vmatprep.subr.mxu0 0.0
  %2856 = vmatpush1.msra.mxu0 0.0
  %2857 = vmatprep.subr.mxu0 0.0
  %2858 = vmatpush1.msra.mxu0 0.0
  %2859 = vmatprep.subr.mxu0 0.0
  %2860 = vmatpush1.msra.mxu0 0.0
  %2861 = vmatprep.subr.mxu0 0.0
  %2862 = vmatpush1.msra.mxu0 0.0
  %2863 = vmatprep.subr.mxu0 0.0
  %2864 = vmatpush1.msra.mxu0 0.0
  %2865 = vmatprep.subr.mxu0 0.0
  %2866 = vmatpush1.msra.mxu0 0.0
  %2867 = vmatprep.subr.mxu0 0.0
  %2868 = vmatpush1.msra.mxu0 0.0
  %2869 = vmatprep.subr.mxu0 0.0
  %2870 = vmatpush1.msra.mxu0 0.0
  %2871 = vmatprep.subr.mxu0 0.0
  %2872 = vmatpush1.msra.mxu0 0.0
  %2873 = vmatprep.subr.mxu0 0.0
  %2874 = vmatpush1.msra.mxu0 0.0
  %2875 = vmatprep.mubr.f32.mxu0 0.0
  %2876 = vmatmul.mubr.f32.gmra.mrb[0].mxu0 %v1668
  %v2877 = vpop.f32.mrb[0].mxu0
  %v2878 = vadd.f32 0.0, %v2877
  %v2879 = vpop.f32.mrb[0].mxu0
  %v2880 = vadd.f32 0.0, %v2879
  %2881 = vdwg.mxu0
  %2882 = vmatprep.subr.mxu0 %v1736
  %2883 = vmatpush1.msra.mxu0 %v1734
  %2884 = vmatprep.subr.mxu0 0.0
  %2885 = vmatpush1.msra.mxu0 0.0
  %2886 = vmatprep.subr.mxu0 0.0
  %2887 = vmatpush1.msra.mxu0 0.0
  %2888 = vmatprep.subr.mxu0 0.0
  %2889 = vmatpush1.msra.mxu0 0.0
  %2890 = vmatprep.subr.mxu0 0.0
  %2891 = vmatpush1.msra.mxu0 0.0
  %2892 = vmatprep.subr.mxu0 0.0
  %2893 = vmatpush1.msra.mxu0 0.0
  %2894 = vmatprep.subr.mxu0 0.0
  %2895 = vmatpush1.msra.mxu0 0.0
  %2896 = vmatprep.subr.mxu0 0.0
  %2897 = vmatpush1.msra.mxu0 0.0
  %2898 = vmatprep.subr.mxu0 0.0
  %2899 = vmatpush1.msra.mxu0 0.0
  %2900 = vmatprep.subr.mxu0 0.0
  %2901 = vmatpush1.msra.mxu0 0.0
  %2902 = vmatprep.subr.mxu0 0.0
  %2903 = vmatpush1.msra.mxu0 0.0
  %2904 = vmatprep.subr.mxu0 0.0
  %2905 = vmatpush1.msra.mxu0 0.0
  %2906 = vmatprep.subr.mxu0 0.0
  %2907 = vmatpush1.msra.mxu0 0.0
  %2908 = vmatprep.subr.mxu0 0.0
  %2909 = vmatpush1.msra.mxu0 0.0
  %2910 = vmatprep.subr.mxu0 0.0
  %2911 = vmatpush1.msra.mxu0 0.0
  %2912 = vmatprep.subr.mxu0 0.0
  %2913 = vmatpush1.msra.mxu0 0.0
  %2914 = vmatprep.subr.mxu0 0.0
  %2915 = vmatpush1.msra.mxu0 0.0
  %2916 = vmatprep.subr.mxu0 0.0
  %2917 = vmatpush1.msra.mxu0 0.0
  %2918 = vmatprep.subr.mxu0 0.0
  %2919 = vmatpush1.msra.mxu0 0.0
  %2920 = vmatprep.subr.mxu0 0.0
  %2921 = vmatpush1.msra.mxu0 0.0
  %2922 = vmatprep.subr.mxu0 0.0
  %2923 = vmatpush1.msra.mxu0 0.0
  %2924 = vmatprep.subr.mxu0 0.0
  %2925 = vmatpush1.msra.mxu0 0.0
  %2926 = vmatprep.subr.mxu0 0.0
  %2927 = vmatpush1.msra.mxu0 0.0
  %2928 = vmatprep.subr.mxu0 0.0
  %2929 = vmatpush1.msra.mxu0 0.0
  %2930 = vmatprep.subr.mxu0 0.0
  %2931 = vmatpush1.msra.mxu0 0.0
  %2932 = vmatprep.subr.mxu0 0.0
  %2933 = vmatpush1.msra.mxu0 0.0
  %2934 = vmatprep.subr.mxu0 0.0
  %2935 = vmatpush1.msra.mxu0 0.0
  %2936 = vmatprep.subr.mxu0 0.0
  %2937 = vmatpush1.msra.mxu0 0.0
  %2938 = vmatprep.subr.mxu0 0.0
  %2939 = vmatpush1.msra.mxu0 0.0
  %2940 = vmatprep.subr.mxu0 0.0
  %2941 = vmatpush1.msra.mxu0 0.0
  %2942 = vmatprep.subr.mxu0 0.0
  %2943 = vmatpush1.msra.mxu0 0.0
  %2944 = vmatprep.subr.mxu0 0.0
  %2945 = vmatpush1.msra.mxu0 0.0
  %2946 = vmatprep.mubr.f32.mxu0 0.0
  %2947 = vmatmul.mubr.f32.gmra.mrb[0].mxu0 %v1668
  %v2948 = vpop.f32.mrb[0].mxu0
  %v2949 = vadd.f32 0.0, %v2948
  %v2950 = vpop.f32.mrb[0].mxu0
  %v2951 = vadd.f32 0.0, %v2950
  %2952 = vdwg.mxu0
  %2953 = vmatprep.subr.mxu0 %v1740
  %2954 = vmatpush1.msra.mxu0 %v1738
  %2955 = vmatprep.subr.mxu0 0.0
  %2956 = vmatpush1.msra.mxu0 0.0
  %2957 = vmatprep.subr.mxu0 0.0
  %2958 = vmatpush1.msra.mxu0 0.0
  %2959 = vmatprep.subr.mxu0 0.0
  %2960 = vmatpush1.msra.mxu0 0.0
  %2961 = vmatprep.subr.mxu0 0.0
  %2962 = vmatpush1.msra.mxu0 0.0
  %2963 = vmatprep.subr.mxu0 0.0
  %2964 = vmatpush1.msra.mxu0 0.0
  %2965 = vmatprep.subr.mxu0 0.0
  %2966 = vmatpush1.msra.mxu0 0.0
  %2967 = vmatprep.subr.mxu0 0.0
  %2968 = vmatpush1.msra.mxu0 0.0
  %2969 = vmatprep.subr.mxu0 0.0
  %2970 = vmatpush1.msra.mxu0 0.0
  %2971 = vmatprep.subr.mxu0 0.0
  %2972 = vmatpush1.msra.mxu0 0.0
  %2973 = vmatprep.subr.mxu0 0.0
  %2974 = vmatpush1.msra.mxu0 0.0
  %2975 = vmatprep.subr.mxu0 0.0
  %2976 = vmatpush1.msra.mxu0 0.0
  %2977 = vmatprep.subr.mxu0 0.0
  %2978 = vmatpush1.msra.mxu0 0.0
  %2979 = vmatprep.subr.mxu0 0.0
  %2980 = vmatpush1.msra.mxu0 0.0
  %2981 = vmatprep.subr.mxu0 0.0
  %2982 = vmatpush1.msra.mxu0 0.0
  %2983 = vmatprep.subr.mxu0 0.0
  %2984 = vmatpush1.msra.mxu0 0.0
  %2985 = vmatprep.subr.mxu0 0.0
  %2986 = vmatpush1.msra.mxu0 0.0
  %2987 = vmatprep.subr.mxu0 0.0
  %2988 = vmatpush1.msra.mxu0 0.0
  %2989 = vmatprep.subr.mxu0 0.0
  %2990 = vmatpush1.msra.mxu0 0.0
  %2991 = vmatprep.subr.mxu0 0.0
  %2992 = vmatpush1.msra.mxu0 0.0
  %2993 = vmatprep.subr.mxu0 0.0
  %2994 = vmatpush1.msra.mxu0 0.0
  %2995 = vmatprep.subr.mxu0 0.0
  %2996 = vmatpush1.msra.mxu0 0.0
  %2997 = vmatprep.subr.mxu0 0.0
  %2998 = vmatpush1.msra.mxu0 0.0
  %2999 = vmatprep.subr.mxu0 0.0
  %3000 = vmatpush1.msra.mxu0 0.0
  %3001 = vmatprep.subr.mxu0 0.0
  %3002 = vmatpush1.msra.mxu0 0.0
  %3003 = vmatprep.subr.mxu0 0.0
  %3004 = vmatpush1.msra.mxu0 0.0
  %3005 = vmatprep.subr.mxu0 0.0
  %3006 = vmatpush1.msra.mxu0 0.0
  %3007 = vmatprep.subr.mxu0 0.0
  %3008 = vmatpush1.msra.mxu0 0.0
  %3009 = vmatprep.subr.mxu0 0.0
  %3010 = vmatpush1.msra.mxu0 0.0
  %3011 = vmatprep.subr.mxu0 0.0
  %3012 = vmatpush1.msra.mxu0 0.0
  %3013 = vmatprep.subr.mxu0 0.0
  %3014 = vmatpush1.msra.mxu0 0.0
  %3015 = vmatprep.subr.mxu0 0.0
  %3016 = vmatpush1.msra.mxu0 0.0
  %3017 = vmatprep.mubr.f32.mxu0 0.0
  %3018 = vmatmul.mubr.f32.gmra.mrb[0].mxu0 %v1668
  %v3019 = vpop.f32.mrb[0].mxu0
  %v3020 = vadd.f32 0.0, %v3019
  %v3021 = vpop.f32.mrb[0].mxu0
  %v3022 = vadd.f32 0.0, %v3021
  %3023 = vdwg.mxu0
  %3024 = vmatprep.subr.mxu0 %v1744
  %3025 = vmatpush1.msra.mxu0 %v1742
  %3026 = vmatprep.subr.mxu0 0.0
  %3027 = vmatpush1.msra.mxu0 0.0
  %3028 = vmatprep.subr.mxu0 0.0
  %3029 = vmatpush1.msra.mxu0 0.0
  %3030 = vmatprep.subr.mxu0 0.0
  %3031 = vmatpush1.msra.mxu0 0.0
  %3032 = vmatprep.subr.mxu0 0.0
  %3033 = vmatpush1.msra.mxu0 0.0
  %3034 = vmatprep.subr.mxu0 0.0
  %3035 = vmatpush1.msra.mxu0 0.0
  %3036 = vmatprep.subr.mxu0 0.0
  %3037 = vmatpush1.msra.mxu0 0.0
  %3038 = vmatprep.subr.mxu0 0.0
  %3039 = vmatpush1.msra.mxu0 0.0
  %3040 = vmatprep.subr.mxu0 0.0
  %3041 = vmatpush1.msra.mxu0 0.0
  %3042 = vmatprep.subr.mxu0 0.0
  %3043 = vmatpush1.msra.mxu0 0.0
  %3044 = vmatprep.subr.mxu0 0.0
  %3045 = vmatpush1.msra.mxu0 0.0
  %3046 = vmatprep.subr.mxu0 0.0
  %3047 = vmatpush1.msra.mxu0 0.0
  %3048 = vmatprep.subr.mxu0 0.0
  %3049 = vmatpush1.msra.mxu0 0.0
  %3050 = vmatprep.subr.mxu0 0.0
  %3051 = vmatpush1.msra.mxu0 0.0
  %3052 = vmatprep.subr.mxu0 0.0
  %3053 = vmatpush1.msra.mxu0 0.0
  %3054 = vmatprep.subr.mxu0 0.0
  %3055 = vmatpush1.msra.mxu0 0.0
  %3056 = vmatprep.subr.mxu0 0.0
  %3057 = vmatpush1.msra.mxu0 0.0
  %3058 = vmatprep.subr.mxu0 0.0
  %3059 = vmatpush1.msra.mxu0 0.0
  %3060 = vmatprep.subr.mxu0 0.0
  %3061 = vmatpush1.msra.mxu0 0.0
  %3062 = vmatprep.subr.mxu0 0.0
  %3063 = vmatpush1.msra.mxu0 0.0
  %3064 = vmatprep.subr.mxu0 0.0
  %3065 = vmatpush1.msra.mxu0 0.0
  %3066 = vmatprep.subr.mxu0 0.0
  %3067 = vmatpush1.msra.mxu0 0.0
  %3068 = vmatprep.subr.mxu0 0.0
  %3069 = vmatpush1.msra.mxu0 0.0
  %3070 = vmatprep.subr.mxu0 0.0
  %3071 = vmatpush1.msra.mxu0 0.0
  %3072 = vmatprep.subr.mxu0 0.0
  %3073 = vmatpush1.msra.mxu0 0.0
  %3074 = vmatprep.subr.mxu0 0.0
  %3075 = vmatpush1.msra.mxu0 0.0
  %3076 = vmatprep.subr.mxu0 0.0
  %3077 = vmatpush1.msra.mxu0 0.0
  %3078 = vmatprep.subr.mxu0 0.0
  %3079 = vmatpush1.msra.mxu0 0.0
  %3080 = vmatprep.subr.mxu0 0.0
  %3081 = vmatpush1.msra.mxu0 0.0
  %3082 = vmatprep.subr.mxu0 0.0
  %3083 = vmatpush1.msra.mxu0 0.0
  %3084 = vmatprep.subr.mxu0 0.0
  %3085 = vmatpush1.msra.mxu0 0.0
  %3086 = vmatprep.subr.mxu0 0.0
  %3087 = vmatpush1.msra.mxu0 0.0
  %3088 = vmatprep.mubr.f32.mxu0 0.0
  %3089 = vmatmul.mubr.f32.gmra.mrb[0].mxu0 %v1668
  %v3090 = vpop.f32.mrb[0].mxu0
  %v3091 = vadd.f32 0.0, %v3090
  %v3092 = vpop.f32.mrb[0].mxu0
  %v3093 = vadd.f32 0.0, %v3092
  %3094 = vdwg.mxu0
  %v3095 = vadd.f32 %v1509, %v1813
  %v3096 = vadd.f32 %v1510, %v1815
  %v3097 = vadd.f32 %v1511, %v1884
  %v3098 = vadd.f32 %v1512, %v1886
  %v3099 = vadd.f32 %v1513, %v1955
  %v3100 = vadd.f32 %v1514, %v1957
  %v3101 = vadd.f32 %v1515, %v2026
  %v3102 = vadd.f32 %v1516, %v2028
  %v3103 = vadd.f32 %v1517, %v2097
  %v3104 = vadd.f32 %v1518, %v2099
  %v3105 = vadd.f32 %v1519, %v2168
  %v3106 = vadd.f32 %v1520, %v2170
  %v3107 = vadd.f32 %v1521, %v2239
  %v3108 = vadd.f32 %v1522, %v2241
  %v3109 = vadd.f32 %v1523, %v2310
  %v3110 = vadd.f32 %v1524, %v2312
  %v3111 = vadd.f32 %v1525, %v2381
  %v3112 = vadd.f32 %v1526, %v2383
  %v3113 = vadd.f32 %v1527, %v2452
  %v3114 = vadd.f32 %v1528, %v2454
  %v3115 = vadd.f32 %v1529, %v2523
  %v3116 = vadd.f32 %v1530, %v2525
  %v3117 = vadd.f32 %v1531, %v2594
  %v3118 = vadd.f32 %v1532, %v2596
  %v3119 = vadd.f32 %v1533, %v2665
  %v3120 = vadd.f32 %v1534, %v2667
  %v3121 = vadd.f32 %v1535, %v2736
  %v3122 = vadd.f32 %v1536, %v2738
  %v3123 = vadd.f32 %v1537, %v2807
  %v3124 = vadd.f32 %v1538, %v2809
  %v3125 = vadd.f32 %v1539, %v2878
  %v3126 = vadd.f32 %v1540, %v2880
  %v3127 = vadd.f32 %v1541, %v2949
  %v3128 = vadd.f32 %v1542, %v2951
  %v3129 = vadd.f32 %v1543, %v3020
  %v3130 = vadd.f32 %v1544, %v3022
  %v3131 = vadd.f32 %v1545, %v3091
  %v3132 = vadd.f32 %v1546, %v3093
  %s3133 = scalar_lea.vmem %s1, 16
  %v3134 = vld [vmem:[%s3133] sm:$0xff]
  %3135 = vrot.lane.b32.xlu0 %v14, 126
  %v3136 = vpop.permute.xlu0 %3135
  %3137 = vrot.lane.b32.xlu0 %v60, 126
  %v3138 = vpop.permute.xlu0 %3137
  %3139 = vrot.lane.b32.xlu0 %v15, 126
  %v3140 = vpop.permute.xlu0 %3139
  %3141 = vrot.lane.b32.xlu0 %v61, 126
  %v3142 = vpop.permute.xlu0 %3141
  %3143 = vrot.lane.b32.xlu0 %v16, 126
  %v3144 = vpop.permute.xlu0 %3143
  %3145 = vrot.lane.b32.xlu0 %v62, 126
  %v3146 = vpop.permute.xlu0 %3145
  %3147 = vrot.lane.b32.xlu0 %v17, 126
  %v3148 = vpop.permute.xlu0 %3147
  %3149 = vrot.lane.b32.xlu0 %v63, 126
  %v3150 = vpop.permute.xlu0 %3149
  %3151 = vrot.lane.b32.xlu0 %v18, 126
  %v3152 = vpop.permute.xlu0 %3151
  %3153 = vrot.lane.b32.xlu0 %v64, 126
  %v3154 = vpop.permute.xlu0 %3153
  %3155 = vrot.lane.b32.xlu0 %v19, 126
  %v3156 = vpop.permute.xlu0 %3155
  %3157 = vrot.lane.b32.xlu0 %v65, 126
  %v3158 = vpop.permute.xlu0 %3157
  %3159 = vrot.lane.b32.xlu0 %v20, 126
  %v3160 = vpop.permute.xlu0 %3159
  %3161 = vrot.lane.b32.xlu0 %v66, 126
  %v3162 = vpop.permute.xlu0 %3161
  %3163 = vrot.lane.b32.xlu0 %v21, 126
  %v3164 = vpop.permute.xlu0 %3163
  %3165 = vrot.lane.b32.xlu0 %v67, 126
  %v3166 = vpop.permute.xlu0 %3165
  %3167 = vrot.lane.b32.xlu0 %v22, 126
  %v3168 = vpop.permute.xlu0 %3167
  %3169 = vrot.lane.b32.xlu0 %v68, 126
  %v3170 = vpop.permute.xlu0 %3169
  %3171 = vrot.lane.b32.xlu0 %v23, 126
  %v3172 = vpop.permute.xlu0 %3171
  %3173 = vrot.lane.b32.xlu0 %v69, 126
  %v3174 = vpop.permute.xlu0 %3173
  %3175 = vrot.lane.b32.xlu0 %v24, 126
  %v3176 = vpop.permute.xlu0 %3175
  %3177 = vrot.lane.b32.xlu0 %v70, 126
  %v3178 = vpop.permute.xlu0 %3177
  %3179 = vrot.lane.b32.xlu0 %v25, 126
  %v3180 = vpop.permute.xlu0 %3179
  %3181 = vrot.lane.b32.xlu0 %v71, 126
  %v3182 = vpop.permute.xlu0 %3181
  %3183 = vrot.lane.b32.xlu0 %v26, 126
  %v3184 = vpop.permute.xlu0 %3183
  %3185 = vrot.lane.b32.xlu0 %v72, 126
  %v3186 = vpop.permute.xlu0 %3185
  %3187 = vrot.lane.b32.xlu0 %v27, 126
  %v3188 = vpop.permute.xlu0 %3187
  %3189 = vrot.lane.b32.xlu0 %v73, 126
  %v3190 = vpop.permute.xlu0 %3189
  %3191 = vrot.lane.b32.xlu0 %v28, 126
  %v3192 = vpop.permute.xlu0 %3191
  %3193 = vrot.lane.b32.xlu0 %v74, 126
  %v3194 = vpop.permute.xlu0 %3193
  %3195 = vrot.lane.b32.xlu0 %v29, 126
  %v3196 = vpop.permute.xlu0 %3195
  %3197 = vrot.lane.b32.xlu0 %v75, 126
  %v3198 = vpop.permute.xlu0 %3197
  %3199 = vrot.lane.b32.xlu0 %v30, 126
  %v3200 = vpop.permute.xlu0 %3199
  %3201 = vrot.lane.b32.xlu0 %v76, 126
  %v3202 = vpop.permute.xlu0 %3201
  %3203 = vrot.lane.b32.xlu0 %v31, 126
  %v3204 = vpop.permute.xlu0 %3203
  %3205 = vrot.lane.b32.xlu0 %v77, 126
  %v3206 = vpop.permute.xlu0 %3205
  %3207 = vrot.lane.b32.xlu0 %v32, 126
  %v3208 = vpop.permute.xlu0 %3207
  %3209 = vrot.lane.b32.xlu0 %v78, 126
  %v3210 = vpop.permute.xlu0 %3209
  %3211 = vrot.lane.b32.xlu0 %v33, 126
  %v3212 = vpop.permute.xlu0 %3211
  %vm3213 = vcmask 1031168
  %v3214 = vsel %vm3213, %v3136, %v3138
  %v3215 = vsel %vm3213, %v3138, %v3140
  %v3216 = vsel %vm3213, %v3140, %v3142
  %v3217 = vsel %vm3213, %v3142, %v3144
  %v3218 = vsel %vm3213, %v3144, %v3146
  %v3219 = vsel %vm3213, %v3146, %v3148
  %v3220 = vsel %vm3213, %v3148, %v3150
  %v3221 = vsel %vm3213, %v3150, %v3152
  %v3222 = vsel %vm3213, %v3152, %v3154
  %v3223 = vsel %vm3213, %v3154, %v3156
  %v3224 = vsel %vm3213, %v3156, %v3158
  %v3225 = vsel %vm3213, %v3158, %v3160
  %v3226 = vsel %vm3213, %v3160, %v3162
  %v3227 = vsel %vm3213, %v3162, %v3164
  %v3228 = vsel %vm3213, %v3164, %v3166
  %v3229 = vsel %vm3213, %v3166, %v3168
  %v3230 = vsel %vm3213, %v3168, %v3170
  %v3231 = vsel %vm3213, %v3170, %v3172
  %v3232 = vsel %vm3213, %v3172, %v3174
  %v3233 = vsel %vm3213, %v3174, %v3176
  %v3234 = vsel %vm3213, %v3176, %v3178
  %v3235 = vsel %vm3213, %v3178, %v3180
  %v3236 = vsel %vm3213, %v3180, %v3182
  %v3237 = vsel %vm3213, %v3182, %v3184
  %v3238 = vsel %vm3213, %v3184, %v3186
  %v3239 = vsel %vm3213, %v3186, %v3188
  %v3240 = vsel %vm3213, %v3188, %v3190
  %v3241 = vsel %vm3213, %v3190, %v3192
  %v3242 = vsel %vm3213, %v3192, %v3194
  %v3243 = vsel %vm3213, %v3194, %v3196
  %v3244 = vsel %vm3213, %v3196, %v3198
  %v3245 = vsel %vm3213, %v3198, %v3200
  %v3246 = vsel %vm3213, %v3200, %v3202
  %v3247 = vsel %vm3213, %v3202, %v3204
  %v3248 = vsel %vm3213, %v3204, %v3206
  %v3249 = vsel %vm3213, %v3206, %v3208
  %v3250 = vsel %vm3213, %v3208, %v3210
  %v3251 = vsel %vm3213, %v3210, %v3212
  %v3253 = vsel %vm79, %v3134, 0
  %v3255 = vsel %vm83, %v3214, 0
  %v3257 = vsel %vm83, %v3215, 0
  %v3259 = vsel %vm83, %v3216, 0
  %v3261 = vsel %vm83, %v3217, 0
  %v3263 = vsel %vm83, %v3218, 0
  %v3265 = vsel %vm83, %v3219, 0
  %v3267 = vsel %vm83, %v3220, 0
  %v3269 = vsel %vm83, %v3221, 0
  %v3271 = vsel %vm83, %v3222, 0
  %v3273 = vsel %vm83, %v3223, 0
  %v3275 = vsel %vm83, %v3224, 0
  %v3277 = vsel %vm83, %v3225, 0
  %v3279 = vsel %vm83, %v3226, 0
  %v3281 = vsel %vm83, %v3227, 0
  %v3283 = vsel %vm83, %v3228, 0
  %v3285 = vsel %vm83, %v3229, 0
  %v3287 = vsel %vm83, %v3230, 0
  %v3289 = vsel %vm83, %v3231, 0
  %v3291 = vsel %vm83, %v3232, 0
  %v3293 = vsel %vm83, %v3233, 0
  %v3295 = vsel %vm83, %v3234, 0
  %v3297 = vsel %vm83, %v3235, 0
  %v3299 = vsel %vm83, %v3236, 0
  %v3301 = vsel %vm83, %v3237, 0
  %v3303 = vsel %vm83, %v3238, 0
  %v3305 = vsel %vm83, %v3239, 0
  %v3307 = vsel %vm83, %v3240, 0
  %v3309 = vsel %vm83, %v3241, 0
  %v3311 = vsel %vm83, %v3242, 0
  %v3313 = vsel %vm83, %v3243, 0
  %v3315 = vsel %vm83, %v3244, 0
  %v3317 = vsel %vm83, %v3245, 0
  %v3319 = vsel %vm83, %v3246, 0
  %v3321 = vsel %vm83, %v3247, 0
  %v3323 = vsel %vm83, %v3248, 0
  %v3325 = vsel %vm83, %v3249, 0
  %v3327 = vsel %vm83, %v3250, 0
  %v3329 = vsel %vm83, %v3251, 0
  %3331 = vmatprep.subr.mxu0 %v3257
  %3332 = vmatpush1.msra.mxu0 %v3255
  %3333 = vmatprep.subr.mxu0 0.0
  %3334 = vmatpush1.msra.mxu0 0.0
  %3335 = vmatprep.subr.mxu0 0.0
  %3336 = vmatpush1.msra.mxu0 0.0
  %3337 = vmatprep.subr.mxu0 0.0
  %3338 = vmatpush1.msra.mxu0 0.0
  %3339 = vmatprep.subr.mxu0 0.0
  %3340 = vmatpush1.msra.mxu0 0.0
  %3341 = vmatprep.subr.mxu0 0.0
  %3342 = vmatpush1.msra.mxu0 0.0
  %3343 = vmatprep.subr.mxu0 0.0
  %3344 = vmatpush1.msra.mxu0 0.0
  %3345 = vmatprep.subr.mxu0 0.0
  %3346 = vmatpush1.msra.mxu0 0.0
  %3347 = vmatprep.subr.mxu0 0.0
  %3348 = vmatpush1.msra.mxu0 0.0
  %3349 = vmatprep.subr.mxu0 0.0
  %3350 = vmatpush1.msra.mxu0 0.0
  %3351 = vmatprep.subr.mxu0 0.0
  %3352 = vmatpush1.msra.mxu0 0.0
  %3353 = vmatprep.subr.mxu0 0.0
  %3354 = vmatpush1.msra.mxu0 0.0
  %3355 = vmatprep.subr.mxu0 0.0
  %3356 = vmatpush1.msra.mxu0 0.0
  %3357 = vmatprep.subr.mxu0 0.0
  %3358 = vmatpush1.msra.mxu0 0.0
  %3359 = vmatprep.subr.mxu0 0.0
  %3360 = vmatpush1.msra.mxu0 0.0
  %3361 = vmatprep.subr.mxu0 0.0
  %3362 = vmatpush1.msra.mxu0 0.0
  %3363 = vmatprep.subr.mxu0 0.0
  %3364 = vmatpush1.msra.mxu0 0.0
  %3365 = vmatprep.subr.mxu0 0.0
  %3366 = vmatpush1.msra.mxu0 0.0
  %3367 = vmatprep.subr.mxu0 0.0
  %3368 = vmatpush1.msra.mxu0 0.0
  %3369 = vmatprep.subr.mxu0 0.0
  %3370 = vmatpush1.msra.mxu0 0.0
  %3371 = vmatprep.subr.mxu0 0.0
  %3372 = vmatpush1.msra.mxu0 0.0
  %3373 = vmatprep.subr.mxu0 0.0
  %3374 = vmatpush1.msra.mxu0 0.0
  %3375 = vmatprep.subr.mxu0 0.0
  %3376 = vmatpush1.msra.mxu0 0.0
  %3377 = vmatprep.subr.mxu0 0.0
  %3378 = vmatpush1.msra.mxu0 0.0
  %3379 = vmatprep.subr.mxu0 0.0
  %3380 = vmatpush1.msra.mxu0 0.0
  %3381 = vmatprep.subr.mxu0 0.0
  %3382 = vmatpush1.msra.mxu0 0.0
  %3383 = vmatprep.subr.mxu0 0.0
  %3384 = vmatpush1.msra.mxu0 0.0
  %3385 = vmatprep.subr.mxu0 0.0
  %3386 = vmatpush1.msra.mxu0 0.0
  %3387 = vmatprep.subr.mxu0 0.0
  %3388 = vmatpush1.msra.mxu0 0.0
  %3389 = vmatprep.subr.mxu0 0.0
  %3390 = vmatpush1.msra.mxu0 0.0
  %3391 = vmatprep.subr.mxu0 0.0
  %3392 = vmatpush1.msra.mxu0 0.0
  %3393 = vmatprep.subr.mxu0 0.0
  %3394 = vmatpush1.msra.mxu0 0.0
  %3395 = vmatprep.mubr.f32.mxu0 0.0
  %3396 = vmatmul.mubr.f32.gmra.mrb[0].mxu0 %v3253
  %v3397 = vpop.f32.mrb[0].mxu0
  %v3398 = vadd.f32 0.0, %v3397
  %v3399 = vpop.f32.mrb[0].mxu0
  %v3400 = vadd.f32 0.0, %v3399
  %3401 = vdwg.mxu0
  %3402 = vmatprep.subr.mxu0 %v3261
  %3403 = vmatpush1.msra.mxu0 %v3259
  %3404 = vmatprep.subr.mxu0 0.0
  %3405 = vmatpush1.msra.mxu0 0.0
  %3406 = vmatprep.subr.mxu0 0.0
  %3407 = vmatpush1.msra.mxu0 0.0
  %3408 = vmatprep.subr.mxu0 0.0
  %3409 = vmatpush1.msra.mxu0 0.0
  %3410 = vmatprep.subr.mxu0 0.0
  %3411 = vmatpush1.msra.mxu0 0.0
  %3412 = vmatprep.subr.mxu0 0.0
  %3413 = vmatpush1.msra.mxu0 0.0
  %3414 = vmatprep.subr.mxu0 0.0
  %3415 = vmatpush1.msra.mxu0 0.0
  %3416 = vmatprep.subr.mxu0 0.0
  %3417 = vmatpush1.msra.mxu0 0.0
  %3418 = vmatprep.subr.mxu0 0.0
  %3419 = vmatpush1.msra.mxu0 0.0
  %3420 = vmatprep.subr.mxu0 0.0
  %3421 = vmatpush1.msra.mxu0 0.0
  %3422 = vmatprep.subr.mxu0 0.0
  %3423 = vmatpush1.msra.mxu0 0.0
  %3424 = vmatprep.subr.mxu0 0.0
  %3425 = vmatpush1.msra.mxu0 0.0
  %3426 = vmatprep.subr.mxu0 0.0
  %3427 = vmatpush1.msra.mxu0 0.0
  %3428 = vmatprep.subr.mxu0 0.0
  %3429 = vmatpush1.msra.mxu0 0.0
  %3430 = vmatprep.subr.mxu0 0.0
  %3431 = vmatpush1.msra.mxu0 0.0
  %3432 = vmatprep.subr.mxu0 0.0
  %3433 = vmatpush1.msra.mxu0 0.0
  %3434 = vmatprep.subr.mxu0 0.0
  %3435 = vmatpush1.msra.mxu0 0.0
  %3436 = vmatprep.subr.mxu0 0.0
  %3437 = vmatpush1.msra.mxu0 0.0
  %3438 = vmatprep.subr.mxu0 0.0
  %3439 = vmatpush1.msra.mxu0 0.0
  %3440 = vmatprep.subr.mxu0 0.0
  %3441 = vmatpush1.msra.mxu0 0.0
  %3442 = vmatprep.subr.mxu0 0.0
  %3443 = vmatpush1.msra.mxu0 0.0
  %3444 = vmatprep.subr.mxu0 0.0
  %3445 = vmatpush1.msra.mxu0 0.0
  %3446 = vmatprep.subr.mxu0 0.0
  %3447 = vmatpush1.msra.mxu0 0.0
  %3448 = vmatprep.subr.mxu0 0.0
  %3449 = vmatpush1.msra.mxu0 0.0
  %3450 = vmatprep.subr.mxu0 0.0
  %3451 = vmatpush1.msra.mxu0 0.0
  %3452 = vmatprep.subr.mxu0 0.0
  %3453 = vmatpush1.msra.mxu0 0.0
  %3454 = vmatprep.subr.mxu0 0.0
  %3455 = vmatpush1.msra.mxu0 0.0
  %3456 = vmatprep.subr.mxu0 0.0
  %3457 = vmatpush1.msra.mxu0 0.0
  %3458 = vmatprep.subr.mxu0 0.0
  %3459 = vmatpush1.msra.mxu0 0.0
  %3460 = vmatprep.subr.mxu0 0.0
  %3461 = vmatpush1.msra.mxu0 0.0
  %3462 = vmatprep.subr.mxu0 0.0
  %3463 = vmatpush1.msra.mxu0 0.0
  %3464 = vmatprep.subr.mxu0 0.0
  %3465 = vmatpush1.msra.mxu0 0.0
  %3466 = vmatprep.mubr.f32.mxu0 0.0
  %3467 = vmatmul.mubr.f32.gmra.mrb[0].mxu0 %v3253
  %v3468 = vpop.f32.mrb[0].mxu0
  %v3469 = vadd.f32 0.0, %v3468
  %v3470 = vpop.f32.mrb[0].mxu0
  %v3471 = vadd.f32 0.0, %v3470
  %3472 = vdwg.mxu0
  %3473 = vmatprep.subr.mxu0 %v3265
  %3474 = vmatpush1.msra.mxu0 %v3263
  %3475 = vmatprep.subr.mxu0 0.0
  %3476 = vmatpush1.msra.mxu0 0.0
  %3477 = vmatprep.subr.mxu0 0.0
  %3478 = vmatpush1.msra.mxu0 0.0
  %3479 = vmatprep.subr.mxu0 0.0
  %3480 = vmatpush1.msra.mxu0 0.0
  %3481 = vmatprep.subr.mxu0 0.0
  %3482 = vmatpush1.msra.mxu0 0.0
  %3483 = vmatprep.subr.mxu0 0.0
  %3484 = vmatpush1.msra.mxu0 0.0
  %3485 = vmatprep.subr.mxu0 0.0
  %3486 = vmatpush1.msra.mxu0 0.0
  %3487 = vmatprep.subr.mxu0 0.0
  %3488 = vmatpush1.msra.mxu0 0.0
  %3489 = vmatprep.subr.mxu0 0.0
  %3490 = vmatpush1.msra.mxu0 0.0
  %3491 = vmatprep.subr.mxu0 0.0
  %3492 = vmatpush1.msra.mxu0 0.0
  %3493 = vmatprep.subr.mxu0 0.0
  %3494 = vmatpush1.msra.mxu0 0.0
  %3495 = vmatprep.subr.mxu0 0.0
  %3496 = vmatpush1.msra.mxu0 0.0
  %3497 = vmatprep.subr.mxu0 0.0
  %3498 = vmatpush1.msra.mxu0 0.0
  %3499 = vmatprep.subr.mxu0 0.0
  %3500 = vmatpush1.msra.mxu0 0.0
  %3501 = vmatprep.subr.mxu0 0.0
  %3502 = vmatpush1.msra.mxu0 0.0
  %3503 = vmatprep.subr.mxu0 0.0
  %3504 = vmatpush1.msra.mxu0 0.0
  %3505 = vmatprep.subr.mxu0 0.0
  %3506 = vmatpush1.msra.mxu0 0.0
  %3507 = vmatprep.subr.mxu0 0.0
  %3508 = vmatpush1.msra.mxu0 0.0
  %3509 = vmatprep.subr.mxu0 0.0
  %3510 = vmatpush1.msra.mxu0 0.0
  %3511 = vmatprep.subr.mxu0 0.0
  %3512 = vmatpush1.msra.mxu0 0.0
  %3513 = vmatprep.subr.mxu0 0.0
  %3514 = vmatpush1.msra.mxu0 0.0
  %3515 = vmatprep.subr.mxu0 0.0
  %3516 = vmatpush1.msra.mxu0 0.0
  %3517 = vmatprep.subr.mxu0 0.0
  %3518 = vmatpush1.msra.mxu0 0.0
  %3519 = vmatprep.subr.mxu0 0.0
  %3520 = vmatpush1.msra.mxu0 0.0
  %3521 = vmatprep.subr.mxu0 0.0
  %3522 = vmatpush1.msra.mxu0 0.0
  %3523 = vmatprep.subr.mxu0 0.0
  %3524 = vmatpush1.msra.mxu0 0.0
  %3525 = vmatprep.subr.mxu0 0.0
  %3526 = vmatpush1.msra.mxu0 0.0
  %3527 = vmatprep.subr.mxu0 0.0
  %3528 = vmatpush1.msra.mxu0 0.0
  %3529 = vmatprep.subr.mxu0 0.0
  %3530 = vmatpush1.msra.mxu0 0.0
  %3531 = vmatprep.subr.mxu0 0.0
  %3532 = vmatpush1.msra.mxu0 0.0
  %3533 = vmatprep.subr.mxu0 0.0
  %3534 = vmatpush1.msra.mxu0 0.0
  %3535 = vmatprep.subr.mxu0 0.0
  %3536 = vmatpush1.msra.mxu0 0.0
  %3537 = vmatprep.mubr.f32.mxu0 0.0
  %3538 = vmatmul.mubr.f32.gmra.mrb[0].mxu0 %v3253
  %v3539 = vpop.f32.mrb[0].mxu0
  %v3540 = vadd.f32 0.0, %v3539
  %v3541 = vpop.f32.mrb[0].mxu0
  %v3542 = vadd.f32 0.0, %v3541
  %3543 = vdwg.mxu0
  %3544 = vmatprep.subr.mxu0 %v3269
  %3545 = vmatpush1.msra.mxu0 %v3267
  %3546 = vmatprep.subr.mxu0 0.0
  %3547 = vmatpush1.msra.mxu0 0.0
  %3548 = vmatprep.subr.mxu0 0.0
  %3549 = vmatpush1.msra.mxu0 0.0
  %3550 = vmatprep.subr.mxu0 0.0
  %3551 = vmatpush1.msra.mxu0 0.0
  %3552 = vmatprep.subr.mxu0 0.0
  %3553 = vmatpush1.msra.mxu0 0.0
  %3554 = vmatprep.subr.mxu0 0.0
  %3555 = vmatpush1.msra.mxu0 0.0
  %3556 = vmatprep.subr.mxu0 0.0
  %3557 = vmatpush1.msra.mxu0 0.0
  %3558 = vmatprep.subr.mxu0 0.0
  %3559 = vmatpush1.msra.mxu0 0.0
  %3560 = vmatprep.subr.mxu0 0.0
  %3561 = vmatpush1.msra.mxu0 0.0
  %3562 = vmatprep.subr.mxu0 0.0
  %3563 = vmatpush1.msra.mxu0 0.0
  %3564 = vmatprep.subr.mxu0 0.0
  %3565 = vmatpush1.msra.mxu0 0.0
  %3566 = vmatprep.subr.mxu0 0.0
  %3567 = vmatpush1.msra.mxu0 0.0
  %3568 = vmatprep.subr.mxu0 0.0
  %3569 = vmatpush1.msra.mxu0 0.0
  %3570 = vmatprep.subr.mxu0 0.0
  %3571 = vmatpush1.msra.mxu0 0.0
  %3572 = vmatprep.subr.mxu0 0.0
  %3573 = vmatpush1.msra.mxu0 0.0
  %3574 = vmatprep.subr.mxu0 0.0
  %3575 = vmatpush1.msra.mxu0 0.0
  %3576 = vmatprep.subr.mxu0 0.0
  %3577 = vmatpush1.msra.mxu0 0.0
  %3578 = vmatprep.subr.mxu0 0.0
  %3579 = vmatpush1.msra.mxu0 0.0
  %3580 = vmatprep.subr.mxu0 0.0
  %3581 = vmatpush1.msra.mxu0 0.0
  %3582 = vmatprep.subr.mxu0 0.0
  %3583 = vmatpush1.msra.mxu0 0.0
  %3584 = vmatprep.subr.mxu0 0.0
  %3585 = vmatpush1.msra.mxu0 0.0
  %3586 = vmatprep.subr.mxu0 0.0
  %3587 = vmatpush1.msra.mxu0 0.0
  %3588 = vmatprep.subr.mxu0 0.0
  %3589 = vmatpush1.msra.mxu0 0.0
  %3590 = vmatprep.subr.mxu0 0.0
  %3591 = vmatpush1.msra.mxu0 0.0
  %3592 = vmatprep.subr.mxu0 0.0
  %3593 = vmatpush1.msra.mxu0 0.0
  %3594 = vmatprep.subr.mxu0 0.0
  %3595 = vmatpush1.msra.mxu0 0.0
  %3596 = vmatprep.subr.mxu0 0.0
  %3597 = vmatpush1.msra.mxu0 0.0
  %3598 = vmatprep.subr.mxu0 0.0
  %3599 = vmatpush1.msra.mxu0 0.0
  %3600 = vmatprep.subr.mxu0 0.0
  %3601 = vmatpush1.msra.mxu0 0.0
  %3602 = vmatprep.subr.mxu0 0.0
  %3603 = vmatpush1.msra.mxu0 0.0
  %3604 = vmatprep.subr.mxu0 0.0
  %3605 = vmatpush1.msra.mxu0 0.0
  %3606 = vmatprep.subr.mxu0 0.0
  %3607 = vmatpush1.msra.mxu0 0.0
  %3608 = vmatprep.mubr.f32.mxu0 0.0
  %3609 = vmatmul.mubr.f32.gmra.mrb[0].mxu0 %v3253
  %v3610 = vpop.f32.mrb[0].mxu0
  %v3611 = vadd.f32 0.0, %v3610
  %v3612 = vpop.f32.mrb[0].mxu0
  %v3613 = vadd.f32 0.0, %v3612
  %3614 = vdwg.mxu0
  %3615 = vmatprep.subr.mxu0 %v3273
  %3616 = vmatpush1.msra.mxu0 %v3271
  %3617 = vmatprep.subr.mxu0 0.0
  %3618 = vmatpush1.msra.mxu0 0.0
  %3619 = vmatprep.subr.mxu0 0.0
  %3620 = vmatpush1.msra.mxu0 0.0
  %3621 = vmatprep.subr.mxu0 0.0
  %3622 = vmatpush1.msra.mxu0 0.0
  %3623 = vmatprep.subr.mxu0 0.0
  %3624 = vmatpush1.msra.mxu0 0.0
  %3625 = vmatprep.subr.mxu0 0.0
  %3626 = vmatpush1.msra.mxu0 0.0
  %3627 = vmatprep.subr.mxu0 0.0
  %3628 = vmatpush1.msra.mxu0 0.0
  %3629 = vmatprep.subr.mxu0 0.0
  %3630 = vmatpush1.msra.mxu0 0.0
  %3631 = vmatprep.subr.mxu0 0.0
  %3632 = vmatpush1.msra.mxu0 0.0
  %3633 = vmatprep.subr.mxu0 0.0
  %3634 = vmatpush1.msra.mxu0 0.0
  %3635 = vmatprep.subr.mxu0 0.0
  %3636 = vmatpush1.msra.mxu0 0.0
  %3637 = vmatprep.subr.mxu0 0.0
  %3638 = vmatpush1.msra.mxu0 0.0
  %3639 = vmatprep.subr.mxu0 0.0
  %3640 = vmatpush1.msra.mxu0 0.0
  %3641 = vmatprep.subr.mxu0 0.0
  %3642 = vmatpush1.msra.mxu0 0.0
  %3643 = vmatprep.subr.mxu0 0.0
  %3644 = vmatpush1.msra.mxu0 0.0
  %3645 = vmatprep.subr.mxu0 0.0
  %3646 = vmatpush1.msra.mxu0 0.0
  %3647 = vmatprep.subr.mxu0 0.0
  %3648 = vmatpush1.msra.mxu0 0.0
  %3649 = vmatprep.subr.mxu0 0.0
  %3650 = vmatpush1.msra.mxu0 0.0
  %3651 = vmatprep.subr.mxu0 0.0
  %3652 = vmatpush1.msra.mxu0 0.0
  %3653 = vmatprep.subr.mxu0 0.0
  %3654 = vmatpush1.msra.mxu0 0.0
  %3655 = vmatprep.subr.mxu0 0.0
  %3656 = vmatpush1.msra.mxu0 0.0
  %3657 = vmatprep.subr.mxu0 0.0
  %3658 = vmatpush1.msra.mxu0 0.0
  %3659 = vmatprep.subr.mxu0 0.0
  %3660 = vmatpush1.msra.mxu0 0.0
  %3661 = vmatprep.subr.mxu0 0.0
  %3662 = vmatpush1.msra.mxu0 0.0
  %3663 = vmatprep.subr.mxu0 0.0
  %3664 = vmatpush1.msra.mxu0 0.0
  %3665 = vmatprep.subr.mxu0 0.0
  %3666 = vmatpush1.msra.mxu0 0.0
  %3667 = vmatprep.subr.mxu0 0.0
  %3668 = vmatpush1.msra.mxu0 0.0
  %3669 = vmatprep.subr.mxu0 0.0
  %3670 = vmatpush1.msra.mxu0 0.0
  %3671 = vmatprep.subr.mxu0 0.0
  %3672 = vmatpush1.msra.mxu0 0.0
  %3673 = vmatprep.subr.mxu0 0.0
  %3674 = vmatpush1.msra.mxu0 0.0
  %3675 = vmatprep.subr.mxu0 0.0
  %3676 = vmatpush1.msra.mxu0 0.0
  %3677 = vmatprep.subr.mxu0 0.0
  %3678 = vmatpush1.msra.mxu0 0.0
  %3679 = vmatprep.mubr.f32.mxu0 0.0
  %3680 = vmatmul.mubr.f32.gmra.mrb[0].mxu0 %v3253
  %v3681 = vpop.f32.mrb[0].mxu0
  %v3682 = vadd.f32 0.0, %v3681
  %v3683 = vpop.f32.mrb[0].mxu0
  %v3684 = vadd.f32 0.0, %v3683
  %3685 = vdwg.mxu0
  %3686 = vmatprep.subr.mxu0 %v3277
  %3687 = vmatpush1.msra.mxu0 %v3275
  %3688 = vmatprep.subr.mxu0 0.0
  %3689 = vmatpush1.msra.mxu0 0.0
  %3690 = vmatprep.subr.mxu0 0.0
  %3691 = vmatpush1.msra.mxu0 0.0
  %3692 = vmatprep.subr.mxu0 0.0
  %3693 = vmatpush1.msra.mxu0 0.0
  %3694 = vmatprep.subr.mxu0 0.0
  %3695 = vmatpush1.msra.mxu0 0.0
  %3696 = vmatprep.subr.mxu0 0.0
  %3697 = vmatpush1.msra.mxu0 0.0
  %3698 = vmatprep.subr.mxu0 0.0
  %3699 = vmatpush1.msra.mxu0 0.0
  %3700 = vmatprep.subr.mxu0 0.0
  %3701 = vmatpush1.msra.mxu0 0.0
  %3702 = vmatprep.subr.mxu0 0.0
  %3703 = vmatpush1.msra.mxu0 0.0
  %3704 = vmatprep.subr.mxu0 0.0
  %3705 = vmatpush1.msra.mxu0 0.0
  %3706 = vmatprep.subr.mxu0 0.0
  %3707 = vmatpush1.msra.mxu0 0.0
  %3708 = vmatprep.subr.mxu0 0.0
  %3709 = vmatpush1.msra.mxu0 0.0
  %3710 = vmatprep.subr.mxu0 0.0
  %3711 = vmatpush1.msra.mxu0 0.0
  %3712 = vmatprep.subr.mxu0 0.0
  %3713 = vmatpush1.msra.mxu0 0.0
  %3714 = vmatprep.subr.mxu0 0.0
  %3715 = vmatpush1.msra.mxu0 0.0
  %3716 = vmatprep.subr.mxu0 0.0
  %3717 = vmatpush1.msra.mxu0 0.0
  %3718 = vmatprep.subr.mxu0 0.0
  %3719 = vmatpush1.msra.mxu0 0.0
  %3720 = vmatprep.subr.mxu0 0.0
  %3721 = vmatpush1.msra.mxu0 0.0
  %3722 = vmatprep.subr.mxu0 0.0
  %3723 = vmatpush1.msra.mxu0 0.0
  %3724 = vmatprep.subr.mxu0 0.0
  %3725 = vmatpush1.msra.mxu0 0.0
  %3726 = vmatprep.subr.mxu0 0.0
  %3727 = vmatpush1.msra.mxu0 0.0
  %3728 = vmatprep.subr.mxu0 0.0
  %3729 = vmatpush1.msra.mxu0 0.0
  %3730 = vmatprep.subr.mxu0 0.0
  %3731 = vmatpush1.msra.mxu0 0.0
  %3732 = vmatprep.subr.mxu0 0.0
  %3733 = vmatpush1.msra.mxu0 0.0
  %3734 = vmatprep.subr.mxu0 0.0
  %3735 = vmatpush1.msra.mxu0 0.0
  %3736 = vmatprep.subr.mxu0 0.0
  %3737 = vmatpush1.msra.mxu0 0.0
  %3738 = vmatprep.subr.mxu0 0.0
  %3739 = vmatpush1.msra.mxu0 0.0
  %3740 = vmatprep.subr.mxu0 0.0
  %3741 = vmatpush1.msra.mxu0 0.0
  %3742 = vmatprep.subr.mxu0 0.0
  %3743 = vmatpush1.msra.mxu0 0.0
  %3744 = vmatprep.subr.mxu0 0.0
  %3745 = vmatpush1.msra.mxu0 0.0
  %3746 = vmatprep.subr.mxu0 0.0
  %3747 = vmatpush1.msra.mxu0 0.0
  %3748 = vmatprep.subr.mxu0 0.0
  %3749 = vmatpush1.msra.mxu0 0.0
  %3750 = vmatprep.mubr.f32.mxu0 0.0
  %3751 = vmatmul.mubr.f32.gmra.mrb[0].mxu0 %v3253
  %v3752 = vpop.f32.mrb[0].mxu0
  %v3753 = vadd.f32 0.0, %v3752
  %v3754 = vpop.f32.mrb[0].mxu0
  %v3755 = vadd.f32 0.0, %v3754
  %3756 = vdwg.mxu0
  %3757 = vmatprep.subr.mxu0 %v3281
  %3758 = vmatpush1.msra.mxu0 %v3279
  %3759 = vmatprep.subr.mxu0 0.0
  %3760 = vmatpush1.msra.mxu0 0.0
  %3761 = vmatprep.subr.mxu0 0.0
  %3762 = vmatpush1.msra.mxu0 0.0
  %3763 = vmatprep.subr.mxu0 0.0
  %3764 = vmatpush1.msra.mxu0 0.0
  %3765 = vmatprep.subr.mxu0 0.0
  %3766 = vmatpush1.msra.mxu0 0.0
  %3767 = vmatprep.subr.mxu0 0.0
  %3768 = vmatpush1.msra.mxu0 0.0
  %3769 = vmatprep.subr.mxu0 0.0
  %3770 = vmatpush1.msra.mxu0 0.0
  %3771 = vmatprep.subr.mxu0 0.0
  %3772 = vmatpush1.msra.mxu0 0.0
  %3773 = vmatprep.subr.mxu0 0.0
  %3774 = vmatpush1.msra.mxu0 0.0
  %3775 = vmatprep.subr.mxu0 0.0
  %3776 = vmatpush1.msra.mxu0 0.0
  %3777 = vmatprep.subr.mxu0 0.0
  %3778 = vmatpush1.msra.mxu0 0.0
  %3779 = vmatprep.subr.mxu0 0.0
  %3780 = vmatpush1.msra.mxu0 0.0
  %3781 = vmatprep.subr.mxu0 0.0
  %3782 = vmatpush1.msra.mxu0 0.0
  %3783 = vmatprep.subr.mxu0 0.0
  %3784 = vmatpush1.msra.mxu0 0.0
  %3785 = vmatprep.subr.mxu0 0.0
  %3786 = vmatpush1.msra.mxu0 0.0
  %3787 = vmatprep.subr.mxu0 0.0
  %3788 = vmatpush1.msra.mxu0 0.0
  %3789 = vmatprep.subr.mxu0 0.0
  %3790 = vmatpush1.msra.mxu0 0.0
  %3791 = vmatprep.subr.mxu0 0.0
  %3792 = vmatpush1.msra.mxu0 0.0
  %3793 = vmatprep.subr.mxu0 0.0
  %3794 = vmatpush1.msra.mxu0 0.0
  %3795 = vmatprep.subr.mxu0 0.0
  %3796 = vmatpush1.msra.mxu0 0.0
  %3797 = vmatprep.subr.mxu0 0.0
  %3798 = vmatpush1.msra.mxu0 0.0
  %3799 = vmatprep.subr.mxu0 0.0
  %3800 = vmatpush1.msra.mxu0 0.0
  %3801 = vmatprep.subr.mxu0 0.0
  %3802 = vmatpush1.msra.mxu0 0.0
  %3803 = vmatprep.subr.mxu0 0.0
  %3804 = vmatpush1.msra.mxu0 0.0
  %3805 = vmatprep.subr.mxu0 0.0
  %3806 = vmatpush1.msra.mxu0 0.0
  %3807 = vmatprep.subr.mxu0 0.0
  %3808 = vmatpush1.msra.mxu0 0.0
  %3809 = vmatprep.subr.mxu0 0.0
  %3810 = vmatpush1.msra.mxu0 0.0
  %3811 = vmatprep.subr.mxu0 0.0
  %3812 = vmatpush1.msra.mxu0 0.0
  %3813 = vmatprep.subr.mxu0 0.0
  %3814 = vmatpush1.msra.mxu0 0.0
  %3815 = vmatprep.subr.mxu0 0.0
  %3816 = vmatpush1.msra.mxu0 0.0
  %3817 = vmatprep.subr.mxu0 0.0
  %3818 = vmatpush1.msra.mxu0 0.0
  %3819 = vmatprep.subr.mxu0 0.0
  %3820 = vmatpush1.msra.mxu0 0.0
  %3821 = vmatprep.mubr.f32.mxu0 0.0
  %3822 = vmatmul.mubr.f32.gmra.mrb[0].mxu0 %v3253
  %v3823 = vpop.f32.mrb[0].mxu0
  %v3824 = vadd.f32 0.0, %v3823
  %v3825 = vpop.f32.mrb[0].mxu0
  %v3826 = vadd.f32 0.0, %v3825
  %3827 = vdwg.mxu0
  %3828 = vmatprep.subr.mxu0 %v3285
  %3829 = vmatpush1.msra.mxu0 %v3283
  %3830 = vmatprep.subr.mxu0 0.0
  %3831 = vmatpush1.msra.mxu0 0.0
  %3832 = vmatprep.subr.mxu0 0.0
  %3833 = vmatpush1.msra.mxu0 0.0
  %3834 = vmatprep.subr.mxu0 0.0
  %3835 = vmatpush1.msra.mxu0 0.0
  %3836 = vmatprep.subr.mxu0 0.0
  %3837 = vmatpush1.msra.mxu0 0.0
  %3838 = vmatprep.subr.mxu0 0.0
  %3839 = vmatpush1.msra.mxu0 0.0
  %3840 = vmatprep.subr.mxu0 0.0
  %3841 = vmatpush1.msra.mxu0 0.0
  %3842 = vmatprep.subr.mxu0 0.0
  %3843 = vmatpush1.msra.mxu0 0.0
  %3844 = vmatprep.subr.mxu0 0.0
  %3845 = vmatpush1.msra.mxu0 0.0
  %3846 = vmatprep.subr.mxu0 0.0
  %3847 = vmatpush1.msra.mxu0 0.0
  %3848 = vmatprep.subr.mxu0 0.0
  %3849 = vmatpush1.msra.mxu0 0.0
  %3850 = vmatprep.subr.mxu0 0.0
  %3851 = vmatpush1.msra.mxu0 0.0
  %3852 = vmatprep.subr.mxu0 0.0
  %3853 = vmatpush1.msra.mxu0 0.0
  %3854 = vmatprep.subr.mxu0 0.0
  %3855 = vmatpush1.msra.mxu0 0.0
  %3856 = vmatprep.subr.mxu0 0.0
  %3857 = vmatpush1.msra.mxu0 0.0
  %3858 = vmatprep.subr.mxu0 0.0
  %3859 = vmatpush1.msra.mxu0 0.0
  %3860 = vmatprep.subr.mxu0 0.0
  %3861 = vmatpush1.msra.mxu0 0.0
  %3862 = vmatprep.subr.mxu0 0.0
  %3863 = vmatpush1.msra.mxu0 0.0
  %3864 = vmatprep.subr.mxu0 0.0
  %3865 = vmatpush1.msra.mxu0 0.0
  %3866 = vmatprep.subr.mxu0 0.0
  %3867 = vmatpush1.msra.mxu0 0.0
  %3868 = vmatprep.subr.mxu0 0.0
  %3869 = vmatpush1.msra.mxu0 0.0
  %3870 = vmatprep.subr.mxu0 0.0
  %3871 = vmatpush1.msra.mxu0 0.0
  %3872 = vmatprep.subr.mxu0 0.0
  %3873 = vmatpush1.msra.mxu0 0.0
  %3874 = vmatprep.subr.mxu0 0.0
  %3875 = vmatpush1.msra.mxu0 0.0
  %3876 = vmatprep.subr.mxu0 0.0
  %3877 = vmatpush1.msra.mxu0 0.0
  %3878 = vmatprep.subr.mxu0 0.0
  %3879 = vmatpush1.msra.mxu0 0.0
  %3880 = vmatprep.subr.mxu0 0.0
  %3881 = vmatpush1.msra.mxu0 0.0
  %3882 = vmatprep.subr.mxu0 0.0
  %3883 = vmatpush1.msra.mxu0 0.0
  %3884 = vmatprep.subr.mxu0 0.0
  %3885 = vmatpush1.msra.mxu0 0.0
  %3886 = vmatprep.subr.mxu0 0.0
  %3887 = vmatpush1.msra.mxu0 0.0
  %3888 = vmatprep.subr.mxu0 0.0
  %3889 = vmatpush1.msra.mxu0 0.0
  %3890 = vmatprep.subr.mxu0 0.0
  %3891 = vmatpush1.msra.mxu0 0.0
  %3892 = vmatprep.mubr.f32.mxu0 0.0
  %3893 = vmatmul.mubr.f32.gmra.mrb[0].mxu0 %v3253
  %v3894 = vpop.f32.mrb[0].mxu0
  %v3895 = vadd.f32 0.0, %v3894
  %v3896 = vpop.f32.mrb[0].mxu0
  %v3897 = vadd.f32 0.0, %v3896
  %3898 = vdwg.mxu0
  %3899 = vmatprep.subr.mxu0 %v3289
  %3900 = vmatpush1.msra.mxu0 %v3287
  %3901 = vmatprep.subr.mxu0 0.0
  %3902 = vmatpush1.msra.mxu0 0.0
  %3903 = vmatprep.subr.mxu0 0.0
  %3904 = vmatpush1.msra.mxu0 0.0
  %3905 = vmatprep.subr.mxu0 0.0
  %3906 = vmatpush1.msra.mxu0 0.0
  %3907 = vmatprep.subr.mxu0 0.0
  %3908 = vmatpush1.msra.mxu0 0.0
  %3909 = vmatprep.subr.mxu0 0.0
  %3910 = vmatpush1.msra.mxu0 0.0
  %3911 = vmatprep.subr.mxu0 0.0
  %3912 = vmatpush1.msra.mxu0 0.0
  %3913 = vmatprep.subr.mxu0 0.0
  %3914 = vmatpush1.msra.mxu0 0.0
  %3915 = vmatprep.subr.mxu0 0.0
  %3916 = vmatpush1.msra.mxu0 0.0
  %3917 = vmatprep.subr.mxu0 0.0
  %3918 = vmatpush1.msra.mxu0 0.0
  %3919 = vmatprep.subr.mxu0 0.0
  %3920 = vmatpush1.msra.mxu0 0.0
  %3921 = vmatprep.subr.mxu0 0.0
  %3922 = vmatpush1.msra.mxu0 0.0
  %3923 = vmatprep.subr.mxu0 0.0
  %3924 = vmatpush1.msra.mxu0 0.0
  %3925 = vmatprep.subr.mxu0 0.0
  %3926 = vmatpush1.msra.mxu0 0.0
  %3927 = vmatprep.subr.mxu0 0.0
  %3928 = vmatpush1.msra.mxu0 0.0
  %3929 = vmatprep.subr.mxu0 0.0
  %3930 = vmatpush1.msra.mxu0 0.0
  %3931 = vmatprep.subr.mxu0 0.0
  %3932 = vmatpush1.msra.mxu0 0.0
  %3933 = vmatprep.subr.mxu0 0.0
  %3934 = vmatpush1.msra.mxu0 0.0
  %3935 = vmatprep.subr.mxu0 0.0
  %3936 = vmatpush1.msra.mxu0 0.0
  %3937 = vmatprep.subr.mxu0 0.0
  %3938 = vmatpush1.msra.mxu0 0.0
  %3939 = vmatprep.subr.mxu0 0.0
  %3940 = vmatpush1.msra.mxu0 0.0
  %3941 = vmatprep.subr.mxu0 0.0
  %3942 = vmatpush1.msra.mxu0 0.0
  %3943 = vmatprep.subr.mxu0 0.0
  %3944 = vmatpush1.msra.mxu0 0.0
  %3945 = vmatprep.subr.mxu0 0.0
  %3946 = vmatpush1.msra.mxu0 0.0
  %3947 = vmatprep.subr.mxu0 0.0
  %3948 = vmatpush1.msra.mxu0 0.0
  %3949 = vmatprep.subr.mxu0 0.0
  %3950 = vmatpush1.msra.mxu0 0.0
  %3951 = vmatprep.subr.mxu0 0.0
  %3952 = vmatpush1.msra.mxu0 0.0
  %3953 = vmatprep.subr.mxu0 0.0
  %3954 = vmatpush1.msra.mxu0 0.0
  %3955 = vmatprep.subr.mxu0 0.0
  %3956 = vmatpush1.msra.mxu0 0.0
  %3957 = vmatprep.subr.mxu0 0.0
  %3958 = vmatpush1.msra.mxu0 0.0
  %3959 = vmatprep.subr.mxu0 0.0
  %3960 = vmatpush1.msra.mxu0 0.0
  %3961 = vmatprep.subr.mxu0 0.0
  %3962 = vmatpush1.msra.mxu0 0.0
  %3963 = vmatprep.mubr.f32.mxu0 0.0
  %3964 = vmatmul.mubr.f32.gmra.mrb[0].mxu0 %v3253
  %v3965 = vpop.f32.mrb[0].mxu0
  %v3966 = vadd.f32 0.0, %v3965
  %v3967 = vpop.f32.mrb[0].mxu0
  %v3968 = vadd.f32 0.0, %v3967
  %3969 = vdwg.mxu0
  %3970 = vmatprep.subr.mxu0 %v3293
  %3971 = vmatpush1.msra.mxu0 %v3291
  %3972 = vmatprep.subr.mxu0 0.0
  %3973 = vmatpush1.msra.mxu0 0.0
  %3974 = vmatprep.subr.mxu0 0.0
  %3975 = vmatpush1.msra.mxu0 0.0
  %3976 = vmatprep.subr.mxu0 0.0
  %3977 = vmatpush1.msra.mxu0 0.0
  %3978 = vmatprep.subr.mxu0 0.0
  %3979 = vmatpush1.msra.mxu0 0.0
  %3980 = vmatprep.subr.mxu0 0.0
  %3981 = vmatpush1.msra.mxu0 0.0
  %3982 = vmatprep.subr.mxu0 0.0
  %3983 = vmatpush1.msra.mxu0 0.0
  %3984 = vmatprep.subr.mxu0 0.0
  %3985 = vmatpush1.msra.mxu0 0.0
  %3986 = vmatprep.subr.mxu0 0.0
  %3987 = vmatpush1.msra.mxu0 0.0
  %3988 = vmatprep.subr.mxu0 0.0
  %3989 = vmatpush1.msra.mxu0 0.0
  %3990 = vmatprep.subr.mxu0 0.0
  %3991 = vmatpush1.msra.mxu0 0.0
  %3992 = vmatprep.subr.mxu0 0.0
  %3993 = vmatpush1.msra.mxu0 0.0
  %3994 = vmatprep.subr.mxu0 0.0
  %3995 = vmatpush1.msra.mxu0 0.0
  %3996 = vmatprep.subr.mxu0 0.0
  %3997 = vmatpush1.msra.mxu0 0.0
  %3998 = vmatprep.subr.mxu0 0.0
  %3999 = vmatpush1.msra.mxu0 0.0
  %4000 = vmatprep.subr.mxu0 0.0
  %4001 = vmatpush1.msra.mxu0 0.0
  %4002 = vmatprep.subr.mxu0 0.0
  %4003 = vmatpush1.msra.mxu0 0.0
  %4004 = vmatprep.subr.mxu0 0.0
  %4005 = vmatpush1.msra.mxu0 0.0
  %4006 = vmatprep.subr.mxu0 0.0
  %4007 = vmatpush1.msra.mxu0 0.0
  %4008 = vmatprep.subr.mxu0 0.0
  %4009 = vmatpush1.msra.mxu0 0.0
  %4010 = vmatprep.subr.mxu0 0.0
  %4011 = vmatpush1.msra.mxu0 0.0
  %4012 = vmatprep.subr.mxu0 0.0
  %4013 = vmatpush1.msra.mxu0 0.0
  %4014 = vmatprep.subr.mxu0 0.0
  %4015 = vmatpush1.msra.mxu0 0.0
  %4016 = vmatprep.subr.mxu0 0.0
  %4017 = vmatpush1.msra.mxu0 0.0
  %4018 = vmatprep.subr.mxu0 0.0
  %4019 = vmatpush1.msra.mxu0 0.0
  %4020 = vmatprep.subr.mxu0 0.0
  %4021 = vmatpush1.msra.mxu0 0.0
  %4022 = vmatprep.subr.mxu0 0.0
  %4023 = vmatpush1.msra.mxu0 0.0
  %4024 = vmatprep.subr.mxu0 0.0
  %4025 = vmatpush1.msra.mxu0 0.0
  %4026 = vmatprep.subr.mxu0 0.0
  %4027 = vmatpush1.msra.mxu0 0.0
  %4028 = vmatprep.subr.mxu0 0.0
  %4029 = vmatpush1.msra.mxu0 0.0
  %4030 = vmatprep.subr.mxu0 0.0
  %4031 = vmatpush1.msra.mxu0 0.0
  %4032 = vmatprep.subr.mxu0 0.0
  %4033 = vmatpush1.msra.mxu0 0.0
  %4034 = vmatprep.mubr.f32.mxu0 0.0
  %4035 = vmatmul.mubr.f32.gmra.mrb[0].mxu0 %v3253
  %v4036 = vpop.f32.mrb[0].mxu0
  %v4037 = vadd.f32 0.0, %v4036
  %v4038 = vpop.f32.mrb[0].mxu0
  %v4039 = vadd.f32 0.0, %v4038
  %4040 = vdwg.mxu0
  %4041 = vmatprep.subr.mxu0 %v3297
  %4042 = vmatpush1.msra.mxu0 %v3295
  %4043 = vmatprep.subr.mxu0 0.0
  %4044 = vmatpush1.msra.mxu0 0.0
  %4045 = vmatprep.subr.mxu0 0.0
  %4046 = vmatpush1.msra.mxu0 0.0
  %4047 = vmatprep.subr.mxu0 0.0
  %4048 = vmatpush1.msra.mxu0 0.0
  %4049 = vmatprep.subr.mxu0 0.0
  %4050 = vmatpush1.msra.mxu0 0.0
  %4051 = vmatprep.subr.mxu0 0.0
  %4052 = vmatpush1.msra.mxu0 0.0
  %4053 = vmatprep.subr.mxu0 0.0
  %4054 = vmatpush1.msra.mxu0 0.0
  %4055 = vmatprep.subr.mxu0 0.0
  %4056 = vmatpush1.msra.mxu0 0.0
  %4057 = vmatprep.subr.mxu0 0.0
  %4058 = vmatpush1.msra.mxu0 0.0
  %4059 = vmatprep.subr.mxu0 0.0
  %4060 = vmatpush1.msra.mxu0 0.0
  %4061 = vmatprep.subr.mxu0 0.0
  %4062 = vmatpush1.msra.mxu0 0.0
  %4063 = vmatprep.subr.mxu0 0.0
  %4064 = vmatpush1.msra.mxu0 0.0
  %4065 = vmatprep.subr.mxu0 0.0
  %4066 = vmatpush1.msra.mxu0 0.0
  %4067 = vmatprep.subr.mxu0 0.0
  %4068 = vmatpush1.msra.mxu0 0.0
  %4069 = vmatprep.subr.mxu0 0.0
  %4070 = vmatpush1.msra.mxu0 0.0
  %4071 = vmatprep.subr.mxu0 0.0
  %4072 = vmatpush1.msra.mxu0 0.0
  %4073 = vmatprep.subr.mxu0 0.0
  %4074 = vmatpush1.msra.mxu0 0.0
  %4075 = vmatprep.subr.mxu0 0.0
  %4076 = vmatpush1.msra.mxu0 0.0
  %4077 = vmatprep.subr.mxu0 0.0
  %4078 = vmatpush1.msra.mxu0 0.0
  %4079 = vmatprep.subr.mxu0 0.0
  %4080 = vmatpush1.msra.mxu0 0.0
  %4081 = vmatprep.subr.mxu0 0.0
  %4082 = vmatpush1.msra.mxu0 0.0
  %4083 = vmatprep.subr.mxu0 0.0
  %4084 = vmatpush1.msra.mxu0 0.0
  %4085 = vmatprep.subr.mxu0 0.0
  %4086 = vmatpush1.msra.mxu0 0.0
  %4087 = vmatprep.subr.mxu0 0.0
  %4088 = vmatpush1.msra.mxu0 0.0
  %4089 = vmatprep.subr.mxu0 0.0
  %4090 = vmatpush1.msra.mxu0 0.0
  %4091 = vmatprep.subr.mxu0 0.0
  %4092 = vmatpush1.msra.mxu0 0.0
  %4093 = vmatprep.subr.mxu0 0.0
  %4094 = vmatpush1.msra.mxu0 0.0
  %4095 = vmatprep.subr.mxu0 0.0
  %4096 = vmatpush1.msra.mxu0 0.0
  %4097 = vmatprep.subr.mxu0 0.0
  %4098 = vmatpush1.msra.mxu0 0.0
  %4099 = vmatprep.subr.mxu0 0.0
  %4100 = vmatpush1.msra.mxu0 0.0
  %4101 = vmatprep.subr.mxu0 0.0
  %4102 = vmatpush1.msra.mxu0 0.0
  %4103 = vmatprep.subr.mxu0 0.0
  %4104 = vmatpush1.msra.mxu0 0.0
  %4105 = vmatprep.mubr.f32.mxu0 0.0
  %4106 = vmatmul.mubr.f32.gmra.mrb[0].mxu0 %v3253
  %v4107 = vpop.f32.mrb[0].mxu0
  %v4108 = vadd.f32 0.0, %v4107
  %v4109 = vpop.f32.mrb[0].mxu0
  %v4110 = vadd.f32 0.0, %v4109
  %4111 = vdwg.mxu0
  %4112 = vmatprep.subr.mxu0 %v3301
  %4113 = vmatpush1.msra.mxu0 %v3299
  %4114 = vmatprep.subr.mxu0 0.0
  %4115 = vmatpush1.msra.mxu0 0.0
  %4116 = vmatprep.subr.mxu0 0.0
  %4117 = vmatpush1.msra.mxu0 0.0
  %4118 = vmatprep.subr.mxu0 0.0
  %4119 = vmatpush1.msra.mxu0 0.0
  %4120 = vmatprep.subr.mxu0 0.0
  %4121 = vmatpush1.msra.mxu0 0.0
  %4122 = vmatprep.subr.mxu0 0.0
  %4123 = vmatpush1.msra.mxu0 0.0
  %4124 = vmatprep.subr.mxu0 0.0
  %4125 = vmatpush1.msra.mxu0 0.0
  %4126 = vmatprep.subr.mxu0 0.0
  %4127 = vmatpush1.msra.mxu0 0.0
  %4128 = vmatprep.subr.mxu0 0.0
  %4129 = vmatpush1.msra.mxu0 0.0
  %4130 = vmatprep.subr.mxu0 0.0
  %4131 = vmatpush1.msra.mxu0 0.0
  %4132 = vmatprep.subr.mxu0 0.0
  %4133 = vmatpush1.msra.mxu0 0.0
  %4134 = vmatprep.subr.mxu0 0.0
  %4135 = vmatpush1.msra.mxu0 0.0
  %4136 = vmatprep.subr.mxu0 0.0
  %4137 = vmatpush1.msra.mxu0 0.0
  %4138 = vmatprep.subr.mxu0 0.0
  %4139 = vmatpush1.msra.mxu0 0.0
  %4140 = vmatprep.subr.mxu0 0.0
  %4141 = vmatpush1.msra.mxu0 0.0
  %4142 = vmatprep.subr.mxu0 0.0
  %4143 = vmatpush1.msra.mxu0 0.0
  %4144 = vmatprep.subr.mxu0 0.0
  %4145 = vmatpush1.msra.mxu0 0.0
  %4146 = vmatprep.subr.mxu0 0.0
  %4147 = vmatpush1.msra.mxu0 0.0
  %4148 = vmatprep.subr.mxu0 0.0
  %4149 = vmatpush1.msra.mxu0 0.0
  %4150 = vmatprep.subr.mxu0 0.0
  %4151 = vmatpush1.msra.mxu0 0.0
  %4152 = vmatprep.subr.mxu0 0.0
  %4153 = vmatpush1.msra.mxu0 0.0
  %4154 = vmatprep.subr.mxu0 0.0
  %4155 = vmatpush1.msra.mxu0 0.0
  %4156 = vmatprep.subr.mxu0 0.0
  %4157 = vmatpush1.msra.mxu0 0.0
  %4158 = vmatprep.subr.mxu0 0.0
  %4159 = vmatpush1.msra.mxu0 0.0
  %4160 = vmatprep.subr.mxu0 0.0
  %4161 = vmatpush1.msra.mxu0 0.0
  %4162 = vmatprep.subr.mxu0 0.0
  %4163 = vmatpush1.msra.mxu0 0.0
  %4164 = vmatprep.subr.mxu0 0.0
  %4165 = vmatpush1.msra.mxu0 0.0
  %4166 = vmatprep.subr.mxu0 0.0
  %4167 = vmatpush1.msra.mxu0 0.0
  %4168 = vmatprep.subr.mxu0 0.0
  %4169 = vmatpush1.msra.mxu0 0.0
  %4170 = vmatprep.subr.mxu0 0.0
  %4171 = vmatpush1.msra.mxu0 0.0
  %4172 = vmatprep.subr.mxu0 0.0
  %4173 = vmatpush1.msra.mxu0 0.0
  %4174 = vmatprep.subr.mxu0 0.0
  %4175 = vmatpush1.msra.mxu0 0.0
  %4176 = vmatprep.mubr.f32.mxu0 0.0
  %4177 = vmatmul.mubr.f32.gmra.mrb[0].mxu0 %v3253
  %v4178 = vpop.f32.mrb[0].mxu0
  %v4179 = vadd.f32 0.0, %v4178
  %v4180 = vpop.f32.mrb[0].mxu0
  %v4181 = vadd.f32 0.0, %v4180
  %4182 = vdwg.mxu0
  %4183 = vmatprep.subr.mxu0 %v3305
  %4184 = vmatpush1.msra.mxu0 %v3303
  %4185 = vmatprep.subr.mxu0 0.0
  %4186 = vmatpush1.msra.mxu0 0.0
  %4187 = vmatprep.subr.mxu0 0.0
  %4188 = vmatpush1.msra.mxu0 0.0
  %4189 = vmatprep.subr.mxu0 0.0
  %4190 = vmatpush1.msra.mxu0 0.0
  %4191 = vmatprep.subr.mxu0 0.0
  %4192 = vmatpush1.msra.mxu0 0.0
  %4193 = vmatprep.subr.mxu0 0.0
  %4194 = vmatpush1.msra.mxu0 0.0
  %4195 = vmatprep.subr.mxu0 0.0
  %4196 = vmatpush1.msra.mxu0 0.0
  %4197 = vmatprep.subr.mxu0 0.0
  %4198 = vmatpush1.msra.mxu0 0.0
  %4199 = vmatprep.subr.mxu0 0.0
  %4200 = vmatpush1.msra.mxu0 0.0
  %4201 = vmatprep.subr.mxu0 0.0
  %4202 = vmatpush1.msra.mxu0 0.0
  %4203 = vmatprep.subr.mxu0 0.0
  %4204 = vmatpush1.msra.mxu0 0.0
  %4205 = vmatprep.subr.mxu0 0.0
  %4206 = vmatpush1.msra.mxu0 0.0
  %4207 = vmatprep.subr.mxu0 0.0
  %4208 = vmatpush1.msra.mxu0 0.0
  %4209 = vmatprep.subr.mxu0 0.0
  %4210 = vmatpush1.msra.mxu0 0.0
  %4211 = vmatprep.subr.mxu0 0.0
  %4212 = vmatpush1.msra.mxu0 0.0
  %4213 = vmatprep.subr.mxu0 0.0
  %4214 = vmatpush1.msra.mxu0 0.0
  %4215 = vmatprep.subr.mxu0 0.0
  %4216 = vmatpush1.msra.mxu0 0.0
  %4217 = vmatprep.subr.mxu0 0.0
  %4218 = vmatpush1.msra.mxu0 0.0
  %4219 = vmatprep.subr.mxu0 0.0
  %4220 = vmatpush1.msra.mxu0 0.0
  %4221 = vmatprep.subr.mxu0 0.0
  %4222 = vmatpush1.msra.mxu0 0.0
  %4223 = vmatprep.subr.mxu0 0.0
  %4224 = vmatpush1.msra.mxu0 0.0
  %4225 = vmatprep.subr.mxu0 0.0
  %4226 = vmatpush1.msra.mxu0 0.0
  %4227 = vmatprep.subr.mxu0 0.0
  %4228 = vmatpush1.msra.mxu0 0.0
  %4229 = vmatprep.subr.mxu0 0.0
  %4230 = vmatpush1.msra.mxu0 0.0
  %4231 = vmatprep.subr.mxu0 0.0
  %4232 = vmatpush1.msra.mxu0 0.0
  %4233 = vmatprep.subr.mxu0 0.0
  %4234 = vmatpush1.msra.mxu0 0.0
  %4235 = vmatprep.subr.mxu0 0.0
  %4236 = vmatpush1.msra.mxu0 0.0
  %4237 = vmatprep.subr.mxu0 0.0
  %4238 = vmatpush1.msra.mxu0 0.0
  %4239 = vmatprep.subr.mxu0 0.0
  %4240 = vmatpush1.msra.mxu0 0.0
  %4241 = vmatprep.subr.mxu0 0.0
  %4242 = vmatpush1.msra.mxu0 0.0
  %4243 = vmatprep.subr.mxu0 0.0
  %4244 = vmatpush1.msra.mxu0 0.0
  %4245 = vmatprep.subr.mxu0 0.0
  %4246 = vmatpush1.msra.mxu0 0.0
  %4247 = vmatprep.mubr.f32.mxu0 0.0
  %4248 = vmatmul.mubr.f32.gmra.mrb[0].mxu0 %v3253
  %v4249 = vpop.f32.mrb[0].mxu0
  %v4250 = vadd.f32 0.0, %v4249
  %v4251 = vpop.f32.mrb[0].mxu0
  %v4252 = vadd.f32 0.0, %v4251
  %4253 = vdwg.mxu0
  %4254 = vmatprep.subr.mxu0 %v3309
  %4255 = vmatpush1.msra.mxu0 %v3307
  %4256 = vmatprep.subr.mxu0 0.0
  %4257 = vmatpush1.msra.mxu0 0.0
  %4258 = vmatprep.subr.mxu0 0.0
  %4259 = vmatpush1.msra.mxu0 0.0
  %4260 = vmatprep.subr.mxu0 0.0
  %4261 = vmatpush1.msra.mxu0 0.0
  %4262 = vmatprep.subr.mxu0 0.0
  %4263 = vmatpush1.msra.mxu0 0.0
  %4264 = vmatprep.subr.mxu0 0.0
  %4265 = vmatpush1.msra.mxu0 0.0
  %4266 = vmatprep.subr.mxu0 0.0
  %4267 = vmatpush1.msra.mxu0 0.0
  %4268 = vmatprep.subr.mxu0 0.0
  %4269 = vmatpush1.msra.mxu0 0.0
  %4270 = vmatprep.subr.mxu0 0.0
  %4271 = vmatpush1.msra.mxu0 0.0
  %4272 = vmatprep.subr.mxu0 0.0
  %4273 = vmatpush1.msra.mxu0 0.0
  %4274 = vmatprep.subr.mxu0 0.0
  %4275 = vmatpush1.msra.mxu0 0.0
  %4276 = vmatprep.subr.mxu0 0.0
  %4277 = vmatpush1.msra.mxu0 0.0
  %4278 = vmatprep.subr.mxu0 0.0
  %4279 = vmatpush1.msra.mxu0 0.0
  %4280 = vmatprep.subr.mxu0 0.0
  %4281 = vmatpush1.msra.mxu0 0.0
  %4282 = vmatprep.subr.mxu0 0.0
  %4283 = vmatpush1.msra.mxu0 0.0
  %4284 = vmatprep.subr.mxu0 0.0
  %4285 = vmatpush1.msra.mxu0 0.0
  %4286 = vmatprep.subr.mxu0 0.0
  %4287 = vmatpush1.msra.mxu0 0.0
  %4288 = vmatprep.subr.mxu0 0.0
  %4289 = vmatpush1.msra.mxu0 0.0
  %4290 = vmatprep.subr.mxu0 0.0
  %4291 = vmatpush1.msra.mxu0 0.0
  %4292 = vmatprep.subr.mxu0 0.0
  %4293 = vmatpush1.msra.mxu0 0.0
  %4294 = vmatprep.subr.mxu0 0.0
  %4295 = vmatpush1.msra.mxu0 0.0
  %4296 = vmatprep.subr.mxu0 0.0
  %4297 = vmatpush1.msra.mxu0 0.0
  %4298 = vmatprep.subr.mxu0 0.0
  %4299 = vmatpush1.msra.mxu0 0.0
  %4300 = vmatprep.subr.mxu0 0.0
  %4301 = vmatpush1.msra.mxu0 0.0
  %4302 = vmatprep.subr.mxu0 0.0
  %4303 = vmatpush1.msra.mxu0 0.0
  %4304 = vmatprep.subr.mxu0 0.0
  %4305 = vmatpush1.msra.mxu0 0.0
  %4306 = vmatprep.subr.mxu0 0.0
  %4307 = vmatpush1.msra.mxu0 0.0
  %4308 = vmatprep.subr.mxu0 0.0
  %4309 = vmatpush1.msra.mxu0 0.0
  %4310 = vmatprep.subr.mxu0 0.0
  %4311 = vmatpush1.msra.mxu0 0.0
  %4312 = vmatprep.subr.mxu0 0.0
  %4313 = vmatpush1.msra.mxu0 0.0
  %4314 = vmatprep.subr.mxu0 0.0
  %4315 = vmatpush1.msra.mxu0 0.0
  %4316 = vmatprep.subr.mxu0 0.0
  %4317 = vmatpush1.msra.mxu0 0.0
  %4318 = vmatprep.mubr.f32.mxu0 0.0
  %4319 = vmatmul.mubr.f32.gmra.mrb[0].mxu0 %v3253
  %v4320 = vpop.f32.mrb[0].mxu0
  %v4321 = vadd.f32 0.0, %v4320
  %v4322 = vpop.f32.mrb[0].mxu0
  %v4323 = vadd.f32 0.0, %v4322
  %4324 = vdwg.mxu0
  %4325 = vmatprep.subr.mxu0 %v3313
  %4326 = vmatpush1.msra.mxu0 %v3311
  %4327 = vmatprep.subr.mxu0 0.0
  %4328 = vmatpush1.msra.mxu0 0.0
  %4329 = vmatprep.subr.mxu0 0.0
  %4330 = vmatpush1.msra.mxu0 0.0
  %4331 = vmatprep.subr.mxu0 0.0
  %4332 = vmatpush1.msra.mxu0 0.0
  %4333 = vmatprep.subr.mxu0 0.0
  %4334 = vmatpush1.msra.mxu0 0.0
  %4335 = vmatprep.subr.mxu0 0.0
  %4336 = vmatpush1.msra.mxu0 0.0
  %4337 = vmatprep.subr.mxu0 0.0
  %4338 = vmatpush1.msra.mxu0 0.0
  %4339 = vmatprep.subr.mxu0 0.0
  %4340 = vmatpush1.msra.mxu0 0.0
  %4341 = vmatprep.subr.mxu0 0.0
  %4342 = vmatpush1.msra.mxu0 0.0
  %4343 = vmatprep.subr.mxu0 0.0
  %4344 = vmatpush1.msra.mxu0 0.0
  %4345 = vmatprep.subr.mxu0 0.0
  %4346 = vmatpush1.msra.mxu0 0.0
  %4347 = vmatprep.subr.mxu0 0.0
  %4348 = vmatpush1.msra.mxu0 0.0
  %4349 = vmatprep.subr.mxu0 0.0
  %4350 = vmatpush1.msra.mxu0 0.0
  %4351 = vmatprep.subr.mxu0 0.0
  %4352 = vmatpush1.msra.mxu0 0.0
  %4353 = vmatprep.subr.mxu0 0.0
  %4354 = vmatpush1.msra.mxu0 0.0
  %4355 = vmatprep.subr.mxu0 0.0
  %4356 = vmatpush1.msra.mxu0 0.0
  %4357 = vmatprep.subr.mxu0 0.0
  %4358 = vmatpush1.msra.mxu0 0.0
  %4359 = vmatprep.subr.mxu0 0.0
  %4360 = vmatpush1.msra.mxu0 0.0
  %4361 = vmatprep.subr.mxu0 0.0
  %4362 = vmatpush1.msra.mxu0 0.0
  %4363 = vmatprep.subr.mxu0 0.0
  %4364 = vmatpush1.msra.mxu0 0.0
  %4365 = vmatprep.subr.mxu0 0.0
  %4366 = vmatpush1.msra.mxu0 0.0
  %4367 = vmatprep.subr.mxu0 0.0
  %4368 = vmatpush1.msra.mxu0 0.0
  %4369 = vmatprep.subr.mxu0 0.0
  %4370 = vmatpush1.msra.mxu0 0.0
  %4371 = vmatprep.subr.mxu0 0.0
  %4372 = vmatpush1.msra.mxu0 0.0
  %4373 = vmatprep.subr.mxu0 0.0
  %4374 = vmatpush1.msra.mxu0 0.0
  %4375 = vmatprep.subr.mxu0 0.0
  %4376 = vmatpush1.msra.mxu0 0.0
  %4377 = vmatprep.subr.mxu0 0.0
  %4378 = vmatpush1.msra.mxu0 0.0
  %4379 = vmatprep.subr.mxu0 0.0
  %4380 = vmatpush1.msra.mxu0 0.0
  %4381 = vmatprep.subr.mxu0 0.0
  %4382 = vmatpush1.msra.mxu0 0.0
  %4383 = vmatprep.subr.mxu0 0.0
  %4384 = vmatpush1.msra.mxu0 0.0
  %4385 = vmatprep.subr.mxu0 0.0
  %4386 = vmatpush1.msra.mxu0 0.0
  %4387 = vmatprep.subr.mxu0 0.0
  %4388 = vmatpush1.msra.mxu0 0.0
  %4389 = vmatprep.mubr.f32.mxu0 0.0
  %4390 = vmatmul.mubr.f32.gmra.mrb[0].mxu0 %v3253
  %v4391 = vpop.f32.mrb[0].mxu0
  %v4392 = vadd.f32 0.0, %v4391
  %v4393 = vpop.f32.mrb[0].mxu0
  %v4394 = vadd.f32 0.0, %v4393
  %4395 = vdwg.mxu0
  %4396 = vmatprep.subr.mxu0 %v3317
  %4397 = vmatpush1.msra.mxu0 %v3315
  %4398 = vmatprep.subr.mxu0 0.0
  %4399 = vmatpush1.msra.mxu0 0.0
  %4400 = vmatprep.subr.mxu0 0.0
  %4401 = vmatpush1.msra.mxu0 0.0
  %4402 = vmatprep.subr.mxu0 0.0
  %4403 = vmatpush1.msra.mxu0 0.0
  %4404 = vmatprep.subr.mxu0 0.0
  %4405 = vmatpush1.msra.mxu0 0.0
  %4406 = vmatprep.subr.mxu0 0.0
  %4407 = vmatpush1.msra.mxu0 0.0
  %4408 = vmatprep.subr.mxu0 0.0
  %4409 = vmatpush1.msra.mxu0 0.0
  %4410 = vmatprep.subr.mxu0 0.0
  %4411 = vmatpush1.msra.mxu0 0.0
  %4412 = vmatprep.subr.mxu0 0.0
  %4413 = vmatpush1.msra.mxu0 0.0
  %4414 = vmatprep.subr.mxu0 0.0
  %4415 = vmatpush1.msra.mxu0 0.0
  %4416 = vmatprep.subr.mxu0 0.0
  %4417 = vmatpush1.msra.mxu0 0.0
  %4418 = vmatprep.subr.mxu0 0.0
  %4419 = vmatpush1.msra.mxu0 0.0
  %4420 = vmatprep.subr.mxu0 0.0
  %4421 = vmatpush1.msra.mxu0 0.0
  %4422 = vmatprep.subr.mxu0 0.0
  %4423 = vmatpush1.msra.mxu0 0.0
  %4424 = vmatprep.subr.mxu0 0.0
  %4425 = vmatpush1.msra.mxu0 0.0
  %4426 = vmatprep.subr.mxu0 0.0
  %4427 = vmatpush1.msra.mxu0 0.0
  %4428 = vmatprep.subr.mxu0 0.0
  %4429 = vmatpush1.msra.mxu0 0.0
  %4430 = vmatprep.subr.mxu0 0.0
  %4431 = vmatpush1.msra.mxu0 0.0
  %4432 = vmatprep.subr.mxu0 0.0
  %4433 = vmatpush1.msra.mxu0 0.0
  %4434 = vmatprep.subr.mxu0 0.0
  %4435 = vmatpush1.msra.mxu0 0.0
  %4436 = vmatprep.subr.mxu0 0.0
  %4437 = vmatpush1.msra.mxu0 0.0
  %4438 = vmatprep.subr.mxu0 0.0
  %4439 = vmatpush1.msra.mxu0 0.0
  %4440 = vmatprep.subr.mxu0 0.0
  %4441 = vmatpush1.msra.mxu0 0.0
  %4442 = vmatprep.subr.mxu0 0.0
  %4443 = vmatpush1.msra.mxu0 0.0
  %4444 = vmatprep.subr.mxu0 0.0
  %4445 = vmatpush1.msra.mxu0 0.0
  %4446 = vmatprep.subr.mxu0 0.0
  %4447 = vmatpush1.msra.mxu0 0.0
  %4448 = vmatprep.subr.mxu0 0.0
  %4449 = vmatpush1.msra.mxu0 0.0
  %4450 = vmatprep.subr.mxu0 0.0
  %4451 = vmatpush1.msra.mxu0 0.0
  %4452 = vmatprep.subr.mxu0 0.0
  %4453 = vmatpush1.msra.mxu0 0.0
  %4454 = vmatprep.subr.mxu0 0.0
  %4455 = vmatpush1.msra.mxu0 0.0
  %4456 = vmatprep.subr.mxu0 0.0
  %4457 = vmatpush1.msra.mxu0 0.0
  %4458 = vmatprep.subr.mxu0 0.0
  %4459 = vmatpush1.msra.mxu0 0.0
  %4460 = vmatprep.mubr.f32.mxu0 0.0
  %4461 = vmatmul.mubr.f32.gmra.mrb[0].mxu0 %v3253
  %v4462 = vpop.f32.mrb[0].mxu0
  %v4463 = vadd.f32 0.0, %v4462
  %v4464 = vpop.f32.mrb[0].mxu0
  %v4465 = vadd.f32 0.0, %v4464
  %4466 = vdwg.mxu0
  %4467 = vmatprep.subr.mxu0 %v3321
  %4468 = vmatpush1.msra.mxu0 %v3319
  %4469 = vmatprep.subr.mxu0 0.0
  %4470 = vmatpush1.msra.mxu0 0.0
  %4471 = vmatprep.subr.mxu0 0.0
  %4472 = vmatpush1.msra.mxu0 0.0
  %4473 = vmatprep.subr.mxu0 0.0
  %4474 = vmatpush1.msra.mxu0 0.0
  %4475 = vmatprep.subr.mxu0 0.0
  %4476 = vmatpush1.msra.mxu0 0.0
  %4477 = vmatprep.subr.mxu0 0.0
  %4478 = vmatpush1.msra.mxu0 0.0
  %4479 = vmatprep.subr.mxu0 0.0
  %4480 = vmatpush1.msra.mxu0 0.0
  %4481 = vmatprep.subr.mxu0 0.0
  %4482 = vmatpush1.msra.mxu0 0.0
  %4483 = vmatprep.subr.mxu0 0.0
  %4484 = vmatpush1.msra.mxu0 0.0
  %4485 = vmatprep.subr.mxu0 0.0
  %4486 = vmatpush1.msra.mxu0 0.0
  %4487 = vmatprep.subr.mxu0 0.0
  %4488 = vmatpush1.msra.mxu0 0.0
  %4489 = vmatprep.subr.mxu0 0.0
  %4490 = vmatpush1.msra.mxu0 0.0
  %4491 = vmatprep.subr.mxu0 0.0
  %4492 = vmatpush1.msra.mxu0 0.0
  %4493 = vmatprep.subr.mxu0 0.0
  %4494 = vmatpush1.msra.mxu0 0.0
  %4495 = vmatprep.subr.mxu0 0.0
  %4496 = vmatpush1.msra.mxu0 0.0
  %4497 = vmatprep.subr.mxu0 0.0
  %4498 = vmatpush1.msra.mxu0 0.0
  %4499 = vmatprep.subr.mxu0 0.0
  %4500 = vmatpush1.msra.mxu0 0.0
  %4501 = vmatprep.subr.mxu0 0.0
  %4502 = vmatpush1.msra.mxu0 0.0
  %4503 = vmatprep.subr.mxu0 0.0
  %4504 = vmatpush1.msra.mxu0 0.0
  %4505 = vmatprep.subr.mxu0 0.0
  %4506 = vmatpush1.msra.mxu0 0.0
  %4507 = vmatprep.subr.mxu0 0.0
  %4508 = vmatpush1.msra.mxu0 0.0
  %4509 = vmatprep.subr.mxu0 0.0
  %4510 = vmatpush1.msra.mxu0 0.0
  %4511 = vmatprep.subr.mxu0 0.0
  %4512 = vmatpush1.msra.mxu0 0.0
  %4513 = vmatprep.subr.mxu0 0.0
  %4514 = vmatpush1.msra.mxu0 0.0
  %4515 = vmatprep.subr.mxu0 0.0
  %4516 = vmatpush1.msra.mxu0 0.0
  %4517 = vmatprep.subr.mxu0 0.0
  %4518 = vmatpush1.msra.mxu0 0.0
  %4519 = vmatprep.subr.mxu0 0.0
  %4520 = vmatpush1.msra.mxu0 0.0
  %4521 = vmatprep.subr.mxu0 0.0
  %4522 = vmatpush1.msra.mxu0 0.0
  %4523 = vmatprep.subr.mxu0 0.0
  %4524 = vmatpush1.msra.mxu0 0.0
  %4525 = vmatprep.subr.mxu0 0.0
  %4526 = vmatpush1.msra.mxu0 0.0
  %4527 = vmatprep.subr.mxu0 0.0
  %4528 = vmatpush1.msra.mxu0 0.0
  %4529 = vmatprep.subr.mxu0 0.0
  %4530 = vmatpush1.msra.mxu0 0.0
  %4531 = vmatprep.mubr.f32.mxu0 0.0
  %4532 = vmatmul.mubr.f32.gmra.mrb[0].mxu0 %v3253
  %v4533 = vpop.f32.mrb[0].mxu0
  %v4534 = vadd.f32 0.0, %v4533
  %v4535 = vpop.f32.mrb[0].mxu0
  %v4536 = vadd.f32 0.0, %v4535
  %4537 = vdwg.mxu0
  %4538 = vmatprep.subr.mxu0 %v3325
  %4539 = vmatpush1.msra.mxu0 %v3323
  %4540 = vmatprep.subr.mxu0 0.0
  %4541 = vmatpush1.msra.mxu0 0.0
  %4542 = vmatprep.subr.mxu0 0.0
  %4543 = vmatpush1.msra.mxu0 0.0
  %4544 = vmatprep.subr.mxu0 0.0
  %4545 = vmatpush1.msra.mxu0 0.0
  %4546 = vmatprep.subr.mxu0 0.0
  %4547 = vmatpush1.msra.mxu0 0.0
  %4548 = vmatprep.subr.mxu0 0.0
  %4549 = vmatpush1.msra.mxu0 0.0
  %4550 = vmatprep.subr.mxu0 0.0
  %4551 = vmatpush1.msra.mxu0 0.0
  %4552 = vmatprep.subr.mxu0 0.0
  %4553 = vmatpush1.msra.mxu0 0.0
  %4554 = vmatprep.subr.mxu0 0.0
  %4555 = vmatpush1.msra.mxu0 0.0
  %4556 = vmatprep.subr.mxu0 0.0
  %4557 = vmatpush1.msra.mxu0 0.0
  %4558 = vmatprep.subr.mxu0 0.0
  %4559 = vmatpush1.msra.mxu0 0.0
  %4560 = vmatprep.subr.mxu0 0.0
  %4561 = vmatpush1.msra.mxu0 0.0
  %4562 = vmatprep.subr.mxu0 0.0
  %4563 = vmatpush1.msra.mxu0 0.0
  %4564 = vmatprep.subr.mxu0 0.0
  %4565 = vmatpush1.msra.mxu0 0.0
  %4566 = vmatprep.subr.mxu0 0.0
  %4567 = vmatpush1.msra.mxu0 0.0
  %4568 = vmatprep.subr.mxu0 0.0
  %4569 = vmatpush1.msra.mxu0 0.0
  %4570 = vmatprep.subr.mxu0 0.0
  %4571 = vmatpush1.msra.mxu0 0.0
  %4572 = vmatprep.subr.mxu0 0.0
  %4573 = vmatpush1.msra.mxu0 0.0
  %4574 = vmatprep.subr.mxu0 0.0
  %4575 = vmatpush1.msra.mxu0 0.0
  %4576 = vmatprep.subr.mxu0 0.0
  %4577 = vmatpush1.msra.mxu0 0.0
  %4578 = vmatprep.subr.mxu0 0.0
  %4579 = vmatpush1.msra.mxu0 0.0
  %4580 = vmatprep.subr.mxu0 0.0
  %4581 = vmatpush1.msra.mxu0 0.0
  %4582 = vmatprep.subr.mxu0 0.0
  %4583 = vmatpush1.msra.mxu0 0.0
  %4584 = vmatprep.subr.mxu0 0.0
  %4585 = vmatpush1.msra.mxu0 0.0
  %4586 = vmatprep.subr.mxu0 0.0
  %4587 = vmatpush1.msra.mxu0 0.0
  %4588 = vmatprep.subr.mxu0 0.0
  %4589 = vmatpush1.msra.mxu0 0.0
  %4590 = vmatprep.subr.mxu0 0.0
  %4591 = vmatpush1.msra.mxu0 0.0
  %4592 = vmatprep.subr.mxu0 0.0
  %4593 = vmatpush1.msra.mxu0 0.0
  %4594 = vmatprep.subr.mxu0 0.0
  %4595 = vmatpush1.msra.mxu0 0.0
  %4596 = vmatprep.subr.mxu0 0.0
  %4597 = vmatpush1.msra.mxu0 0.0
  %4598 = vmatprep.subr.mxu0 0.0
  %4599 = vmatpush1.msra.mxu0 0.0
  %4600 = vmatprep.subr.mxu0 0.0
  %4601 = vmatpush1.msra.mxu0 0.0
  %4602 = vmatprep.mubr.f32.mxu0 0.0
  %4603 = vmatmul.mubr.f32.gmra.mrb[0].mxu0 %v3253
  %v4604 = vpop.f32.mrb[0].mxu0
  %v4605 = vadd.f32 0.0, %v4604
  %v4606 = vpop.f32.mrb[0].mxu0
  %v4607 = vadd.f32 0.0, %v4606
  %4608 = vdwg.mxu0
  %4609 = vmatprep.subr.mxu0 %v3329
  %4610 = vmatpush1.msra.mxu0 %v3327
  %4611 = vmatprep.subr.mxu0 0.0
  %4612 = vmatpush1.msra.mxu0 0.0
  %4613 = vmatprep.subr.mxu0 0.0
  %4614 = vmatpush1.msra.mxu0 0.0
  %4615 = vmatprep.subr.mxu0 0.0
  %4616 = vmatpush1.msra.mxu0 0.0
  %4617 = vmatprep.subr.mxu0 0.0
  %4618 = vmatpush1.msra.mxu0 0.0
  %4619 = vmatprep.subr.mxu0 0.0
  %4620 = vmatpush1.msra.mxu0 0.0
  %4621 = vmatprep.subr.mxu0 0.0
  %4622 = vmatpush1.msra.mxu0 0.0
  %4623 = vmatprep.subr.mxu0 0.0
  %4624 = vmatpush1.msra.mxu0 0.0
  %4625 = vmatprep.subr.mxu0 0.0
  %4626 = vmatpush1.msra.mxu0 0.0
  %4627 = vmatprep.subr.mxu0 0.0
  %4628 = vmatpush1.msra.mxu0 0.0
  %4629 = vmatprep.subr.mxu0 0.0
  %4630 = vmatpush1.msra.mxu0 0.0
  %4631 = vmatprep.subr.mxu0 0.0
  %4632 = vmatpush1.msra.mxu0 0.0
  %4633 = vmatprep.subr.mxu0 0.0
  %4634 = vmatpush1.msra.mxu0 0.0
  %4635 = vmatprep.subr.mxu0 0.0
  %4636 = vmatpush1.msra.mxu0 0.0
  %4637 = vmatprep.subr.mxu0 0.0
  %4638 = vmatpush1.msra.mxu0 0.0
  %4639 = vmatprep.subr.mxu0 0.0
  %4640 = vmatpush1.msra.mxu0 0.0
  %4641 = vmatprep.subr.mxu0 0.0
  %4642 = vmatpush1.msra.mxu0 0.0
  %4643 = vmatprep.subr.mxu0 0.0
  %4644 = vmatpush1.msra.mxu0 0.0
  %4645 = vmatprep.subr.mxu0 0.0
  %4646 = vmatpush1.msra.mxu0 0.0
  %4647 = vmatprep.subr.mxu0 0.0
  %4648 = vmatpush1.msra.mxu0 0.0
  %4649 = vmatprep.subr.mxu0 0.0
  %4650 = vmatpush1.msra.mxu0 0.0
  %4651 = vmatprep.subr.mxu0 0.0
  %4652 = vmatpush1.msra.mxu0 0.0
  %4653 = vmatprep.subr.mxu0 0.0
  %4654 = vmatpush1.msra.mxu0 0.0
  %4655 = vmatprep.subr.mxu0 0.0
  %4656 = vmatpush1.msra.mxu0 0.0
  %4657 = vmatprep.subr.mxu0 0.0
  %4658 = vmatpush1.msra.mxu0 0.0
  %4659 = vmatprep.subr.mxu0 0.0
  %4660 = vmatpush1.msra.mxu0 0.0
  %4661 = vmatprep.subr.mxu0 0.0
  %4662 = vmatpush1.msra.mxu0 0.0
  %4663 = vmatprep.subr.mxu0 0.0
  %4664 = vmatpush1.msra.mxu0 0.0
  %4665 = vmatprep.subr.mxu0 0.0
  %4666 = vmatpush1.msra.mxu0 0.0
  %4667 = vmatprep.subr.mxu0 0.0
  %4668 = vmatpush1.msra.mxu0 0.0
  %4669 = vmatprep.subr.mxu0 0.0
  %4670 = vmatpush1.msra.mxu0 0.0
  %4671 = vmatprep.subr.mxu0 0.0
  %4672 = vmatpush1.msra.mxu0 0.0
  %4673 = vmatprep.mubr.f32.mxu0 0.0
  %4674 = vmatmul.mubr.f32.gmra.mrb[0].mxu0 %v3253
  %v4675 = vpop.f32.mrb[0].mxu0
  %v4676 = vadd.f32 0.0, %v4675
  %v4677 = vpop.f32.mrb[0].mxu0
  %v4678 = vadd.f32 0.0, %v4677
  %4679 = vdwg.mxu0
  %v4680 = vadd.f32 %v3095, %v3398
  %v4681 = vadd.f32 %v3096, %v3400
  %v4682 = vadd.f32 %v3097, %v3469
  %v4683 = vadd.f32 %v3098, %v3471
  %v4684 = vadd.f32 %v3099, %v3540
  %v4685 = vadd.f32 %v3100, %v3542
  %v4686 = vadd.f32 %v3101, %v3611
  %v4687 = vadd.f32 %v3102, %v3613
  %v4688 = vadd.f32 %v3103, %v3682
  %v4689 = vadd.f32 %v3104, %v3684
  %v4690 = vadd.f32 %v3105, %v3753
  %v4691 = vadd.f32 %v3106, %v3755
  %v4692 = vadd.f32 %v3107, %v3824
  %v4693 = vadd.f32 %v3108, %v3826
  %v4694 = vadd.f32 %v3109, %v3895
  %v4695 = vadd.f32 %v3110, %v3897
  %v4696 = vadd.f32 %v3111, %v3966
  %v4697 = vadd.f32 %v3112, %v3968
  %v4698 = vadd.f32 %v3113, %v4037
  %v4699 = vadd.f32 %v3114, %v4039
  %v4700 = vadd.f32 %v3115, %v4108
  %v4701 = vadd.f32 %v3116, %v4110
  %v4702 = vadd.f32 %v3117, %v4179
  %v4703 = vadd.f32 %v3118, %v4181
  %v4704 = vadd.f32 %v3119, %v4250
  %v4705 = vadd.f32 %v3120, %v4252
  %v4706 = vadd.f32 %v3121, %v4321
  %v4707 = vadd.f32 %v3122, %v4323
  %v4708 = vadd.f32 %v3123, %v4392
  %v4709 = vadd.f32 %v3124, %v4394
  %v4710 = vadd.f32 %v3125, %v4463
  %v4711 = vadd.f32 %v3126, %v4465
  %v4712 = vadd.f32 %v3127, %v4534
  %v4713 = vadd.f32 %v3128, %v4536
  %v4714 = vadd.f32 %v3129, %v4605
  %v4715 = vadd.f32 %v3130, %v4607
  %v4716 = vadd.f32 %v3131, %v4676
  %v4717 = vadd.f32 %v3132, %v4678
  %s4718 = scalar_lea.vmem %s1, 24
  %v4719 = vld [vmem:[%s4718] sm:$0xff]
  %4720 = vrot.lane.b32.xlu0 %v14, 58
  %v4721 = vpop.permute.xlu0 %4720
  %4722 = vrot.lane.b32.xlu0 %v60, 58
  %v4723 = vpop.permute.xlu0 %4722
  %4724 = vrot.lane.b32.xlu0 %v15, 58
  %v4725 = vpop.permute.xlu0 %4724
  %4726 = vrot.lane.b32.xlu0 %v61, 58
  %v4727 = vpop.permute.xlu0 %4726
  %4728 = vrot.lane.b32.xlu0 %v16, 58
  %v4729 = vpop.permute.xlu0 %4728
  %4730 = vrot.lane.b32.xlu0 %v62, 58
  %v4731 = vpop.permute.xlu0 %4730
  %4732 = vrot.lane.b32.xlu0 %v17, 58
  %v4733 = vpop.permute.xlu0 %4732
  %4734 = vrot.lane.b32.xlu0 %v63, 58
  %v4735 = vpop.permute.xlu0 %4734
  %4736 = vrot.lane.b32.xlu0 %v18, 58
  %v4737 = vpop.permute.xlu0 %4736
  %4738 = vrot.lane.b32.xlu0 %v64, 58
  %v4739 = vpop.permute.xlu0 %4738
  %4740 = vrot.lane.b32.xlu0 %v19, 58
  %v4741 = vpop.permute.xlu0 %4740
  %4742 = vrot.lane.b32.xlu0 %v65, 58
  %v4743 = vpop.permute.xlu0 %4742
  %4744 = vrot.lane.b32.xlu0 %v20, 58
  %v4745 = vpop.permute.xlu0 %4744
  %4746 = vrot.lane.b32.xlu0 %v66, 58
  %v4747 = vpop.permute.xlu0 %4746
  %4748 = vrot.lane.b32.xlu0 %v21, 58
  %v4749 = vpop.permute.xlu0 %4748
  %4750 = vrot.lane.b32.xlu0 %v67, 58
  %v4751 = vpop.permute.xlu0 %4750
  %4752 = vrot.lane.b32.xlu0 %v22, 58
  %v4753 = vpop.permute.xlu0 %4752
  %4754 = vrot.lane.b32.xlu0 %v68, 58
  %v4755 = vpop.permute.xlu0 %4754
  %4756 = vrot.lane.b32.xlu0 %v23, 58
  %v4757 = vpop.permute.xlu0 %4756
  %4758 = vrot.lane.b32.xlu0 %v69, 58
  %v4759 = vpop.permute.xlu0 %4758
  %4760 = vrot.lane.b32.xlu0 %v24, 58
  %v4761 = vpop.permute.xlu0 %4760
  %4762 = vrot.lane.b32.xlu0 %v70, 58
  %v4763 = vpop.permute.xlu0 %4762
  %4764 = vrot.lane.b32.xlu0 %v25, 58
  %v4765 = vpop.permute.xlu0 %4764
  %4766 = vrot.lane.b32.xlu0 %v71, 58
  %v4767 = vpop.permute.xlu0 %4766
  %4768 = vrot.lane.b32.xlu0 %v26, 58
  %v4769 = vpop.permute.xlu0 %4768
  %4770 = vrot.lane.b32.xlu0 %v72, 58
  %v4771 = vpop.permute.xlu0 %4770
  %4772 = vrot.lane.b32.xlu0 %v27, 58
  %v4773 = vpop.permute.xlu0 %4772
  %4774 = vrot.lane.b32.xlu0 %v73, 58
  %v4775 = vpop.permute.xlu0 %4774
  %4776 = vrot.lane.b32.xlu0 %v28, 58
  %v4777 = vpop.permute.xlu0 %4776
  %4778 = vrot.lane.b32.xlu0 %v74, 58
  %v4779 = vpop.permute.xlu0 %4778
  %4780 = vrot.lane.b32.xlu0 %v29, 58
  %v4781 = vpop.permute.xlu0 %4780
  %4782 = vrot.lane.b32.xlu0 %v75, 58
  %v4783 = vpop.permute.xlu0 %4782
  %4784 = vrot.lane.b32.xlu0 %v30, 58
  %v4785 = vpop.permute.xlu0 %4784
  %4786 = vrot.lane.b32.xlu0 %v76, 58
  %v4787 = vpop.permute.xlu0 %4786
  %4788 = vrot.lane.b32.xlu0 %v31, 58
  %v4789 = vpop.permute.xlu0 %4788
  %4790 = vrot.lane.b32.xlu0 %v77, 58
  %v4791 = vpop.permute.xlu0 %4790
  %4792 = vrot.lane.b32.xlu0 %v32, 58
  %v4793 = vpop.permute.xlu0 %4792
  %4794 = vrot.lane.b32.xlu0 %v78, 58
  %v4795 = vpop.permute.xlu0 %4794
  %4796 = vrot.lane.b32.xlu0 %v33, 58
  %v4797 = vpop.permute.xlu0 %4796
  %vm4798 = vcmask 474112
  %v4799 = vsel %vm4798, %v4721, %v4723
  %v4800 = vsel %vm4798, %v4723, %v4725
  %v4801 = vsel %vm4798, %v4725, %v4727
  %v4802 = vsel %vm4798, %v4727, %v4729
  %v4803 = vsel %vm4798, %v4729, %v4731
  %v4804 = vsel %vm4798, %v4731, %v4733
  %v4805 = vsel %vm4798, %v4733, %v4735
  %v4806 = vsel %vm4798, %v4735, %v4737
  %v4807 = vsel %vm4798, %v4737, %v4739
  %v4808 = vsel %vm4798, %v4739, %v4741
  %v4809 = vsel %vm4798, %v4741, %v4743
  %v4810 = vsel %vm4798, %v4743, %v4745
  %v4811 = vsel %vm4798, %v4745, %v4747
  %v4812 = vsel %vm4798, %v4747, %v4749
  %v4813 = vsel %vm4798, %v4749, %v4751
  %v4814 = vsel %vm4798, %v4751, %v4753
  %v4815 = vsel %vm4798, %v4753, %v4755
  %v4816 = vsel %vm4798, %v4755, %v4757
  %v4817 = vsel %vm4798, %v4757, %v4759
  %v4818 = vsel %vm4798, %v4759, %v4761
  %v4819 = vsel %vm4798, %v4761, %v4763
  %v4820 = vsel %vm4798, %v4763, %v4765
  %v4821 = vsel %vm4798, %v4765, %v4767
  %v4822 = vsel %vm4798, %v4767, %v4769
  %v4823 = vsel %vm4798, %v4769, %v4771
  %v4824 = vsel %vm4798, %v4771, %v4773
  %v4825 = vsel %vm4798, %v4773, %v4775
  %v4826 = vsel %vm4798, %v4775, %v4777
  %v4827 = vsel %vm4798, %v4777, %v4779
  %v4828 = vsel %vm4798, %v4779, %v4781
  %v4829 = vsel %vm4798, %v4781, %v4783
  %v4830 = vsel %vm4798, %v4783, %v4785
  %v4831 = vsel %vm4798, %v4785, %v4787
  %v4832 = vsel %vm4798, %v4787, %v4789
  %v4833 = vsel %vm4798, %v4789, %v4791
  %v4834 = vsel %vm4798, %v4791, %v4793
  %v4835 = vsel %vm4798, %v4793, %v4795
  %v4836 = vsel %vm4798, %v4795, %v4797
  %v4838 = vsel %vm79, %v4719, 0
  %v4840 = vsel %vm83, %v4799, 0
  %v4842 = vsel %vm83, %v4800, 0
  %v4844 = vsel %vm83, %v4801, 0
  %v4846 = vsel %vm83, %v4802, 0
  %v4848 = vsel %vm83, %v4803, 0
  %v4850 = vsel %vm83, %v4804, 0
  %v4852 = vsel %vm83, %v4805, 0
  %v4854 = vsel %vm83, %v4806, 0
  %v4856 = vsel %vm83, %v4807, 0
  %v4858 = vsel %vm83, %v4808, 0
  %v4860 = vsel %vm83, %v4809, 0
  %v4862 = vsel %vm83, %v4810, 0
  %v4864 = vsel %vm83, %v4811, 0
  %v4866 = vsel %vm83, %v4812, 0
  %v4868 = vsel %vm83, %v4813, 0
  %v4870 = vsel %vm83, %v4814, 0
  %v4872 = vsel %vm83, %v4815, 0
  %v4874 = vsel %vm83, %v4816, 0
  %v4876 = vsel %vm83, %v4817, 0
  %v4878 = vsel %vm83, %v4818, 0
  %v4880 = vsel %vm83, %v4819, 0
  %v4882 = vsel %vm83, %v4820, 0
  %v4884 = vsel %vm83, %v4821, 0
  %v4886 = vsel %vm83, %v4822, 0
  %v4888 = vsel %vm83, %v4823, 0
  %v4890 = vsel %vm83, %v4824, 0
  %v4892 = vsel %vm83, %v4825, 0
  %v4894 = vsel %vm83, %v4826, 0
  %v4896 = vsel %vm83, %v4827, 0
  %v4898 = vsel %vm83, %v4828, 0
  %v4900 = vsel %vm83, %v4829, 0
  %v4902 = vsel %vm83, %v4830, 0
  %v4904 = vsel %vm83, %v4831, 0
  %v4906 = vsel %vm83, %v4832, 0
  %v4908 = vsel %vm83, %v4833, 0
  %v4910 = vsel %vm83, %v4834, 0
  %v4912 = vsel %vm83, %v4835, 0
  %v4914 = vsel %vm83, %v4836, 0
  %4916 = vmatprep.subr.mxu0 %v4842
  %4917 = vmatpush1.msra.mxu0 %v4840
  %4918 = vmatprep.subr.mxu0 0.0
  %4919 = vmatpush1.msra.mxu0 0.0
  %4920 = vmatprep.subr.mxu0 0.0
  %4921 = vmatpush1.msra.mxu0 0.0
  %4922 = vmatprep.subr.mxu0 0.0
  %4923 = vmatpush1.msra.mxu0 0.0
  %4924 = vmatprep.subr.mxu0 0.0
  %4925 = vmatpush1.msra.mxu0 0.0
  %4926 = vmatprep.subr.mxu0 0.0
  %4927 = vmatpush1.msra.mxu0 0.0
  %4928 = vmatprep.subr.mxu0 0.0
  %4929 = vmatpush1.msra.mxu0 0.0
  %4930 = vmatprep.subr.mxu0 0.0
  %4931 = vmatpush1.msra.mxu0 0.0
  %4932 = vmatprep.subr.mxu0 0.0
  %4933 = vmatpush1.msra.mxu0 0.0
  %4934 = vmatprep.subr.mxu0 0.0
  %4935 = vmatpush1.msra.mxu0 0.0
  %4936 = vmatprep.subr.mxu0 0.0
  %4937 = vmatpush1.msra.mxu0 0.0
  %4938 = vmatprep.subr.mxu0 0.0
  %4939 = vmatpush1.msra.mxu0 0.0
  %4940 = vmatprep.subr.mxu0 0.0
  %4941 = vmatpush1.msra.mxu0 0.0
  %4942 = vmatprep.subr.mxu0 0.0
  %4943 = vmatpush1.msra.mxu0 0.0
  %4944 = vmatprep.subr.mxu0 0.0
  %4945 = vmatpush1.msra.mxu0 0.0
  %4946 = vmatprep.subr.mxu0 0.0
  %4947 = vmatpush1.msra.mxu0 0.0
  %4948 = vmatprep.subr.mxu0 0.0
  %4949 = vmatpush1.msra.mxu0 0.0
  %4950 = vmatprep.subr.mxu0 0.0
  %4951 = vmatpush1.msra.mxu0 0.0
  %4952 = vmatprep.subr.mxu0 0.0
  %4953 = vmatpush1.msra.mxu0 0.0
  %4954 = vmatprep.subr.mxu0 0.0
  %4955 = vmatpush1.msra.mxu0 0.0
  %4956 = vmatprep.subr.mxu0 0.0
  %4957 = vmatpush1.msra.mxu0 0.0
  %4958 = vmatprep.subr.mxu0 0.0
  %4959 = vmatpush1.msra.mxu0 0.0
  %4960 = vmatprep.subr.mxu0 0.0
  %4961 = vmatpush1.msra.mxu0 0.0
  %4962 = vmatprep.subr.mxu0 0.0
  %4963 = vmatpush1.msra.mxu0 0.0
  %4964 = vmatprep.subr.mxu0 0.0
  %4965 = vmatpush1.msra.mxu0 0.0
  %4966 = vmatprep.subr.mxu0 0.0
  %4967 = vmatpush1.msra.mxu0 0.0
  %4968 = vmatprep.subr.mxu0 0.0
  %4969 = vmatpush1.msra.mxu0 0.0
  %4970 = vmatprep.subr.mxu0 0.0
  %4971 = vmatpush1.msra.mxu0 0.0
  %4972 = vmatprep.subr.mxu0 0.0
  %4973 = vmatpush1.msra.mxu0 0.0
  %4974 = vmatprep.subr.mxu0 0.0
  %4975 = vmatpush1.msra.mxu0 0.0
  %4976 = vmatprep.subr.mxu0 0.0
  %4977 = vmatpush1.msra.mxu0 0.0
  %4978 = vmatprep.subr.mxu0 0.0
  %4979 = vmatpush1.msra.mxu0 0.0
  %4980 = vmatprep.mubr.f32.mxu0 0.0
  %4981 = vmatmul.mubr.f32.gmra.mrb[0].mxu0 %v4838
  %v4982 = vpop.f32.mrb[0].mxu0
  %v4983 = vadd.f32 0.0, %v4982
  %v4984 = vpop.f32.mrb[0].mxu0
  %v4985 = vadd.f32 0.0, %v4984
  %4986 = vdwg.mxu0
  %4987 = vmatprep.subr.mxu0 %v4846
  %4988 = vmatpush1.msra.mxu0 %v4844
  %4989 = vmatprep.subr.mxu0 0.0
  %4990 = vmatpush1.msra.mxu0 0.0
  %4991 = vmatprep.subr.mxu0 0.0
  %4992 = vmatpush1.msra.mxu0 0.0
  %4993 = vmatprep.subr.mxu0 0.0
  %4994 = vmatpush1.msra.mxu0 0.0
  %4995 = vmatprep.subr.mxu0 0.0
  %4996 = vmatpush1.msra.mxu0 0.0
  %4997 = vmatprep.subr.mxu0 0.0
  %4998 = vmatpush1.msra.mxu0 0.0
  %4999 = vmatprep.subr.mxu0 0.0
  %5000 = vmatpush1.msra.mxu0 0.0
  %5001 = vmatprep.subr.mxu0 0.0
  %5002 = vmatpush1.msra.mxu0 0.0
  %5003 = vmatprep.subr.mxu0 0.0
  %5004 = vmatpush1.msra.mxu0 0.0
  %5005 = vmatprep.subr.mxu0 0.0
  %5006 = vmatpush1.msra.mxu0 0.0
  %5007 = vmatprep.subr.mxu0 0.0
  %5008 = vmatpush1.msra.mxu0 0.0
  %5009 = vmatprep.subr.mxu0 0.0
  %5010 = vmatpush1.msra.mxu0 0.0
  %5011 = vmatprep.subr.mxu0 0.0
  %5012 = vmatpush1.msra.mxu0 0.0
  %5013 = vmatprep.subr.mxu0 0.0
  %5014 = vmatpush1.msra.mxu0 0.0
  %5015 = vmatprep.subr.mxu0 0.0
  %5016 = vmatpush1.msra.mxu0 0.0
  %5017 = vmatprep.subr.mxu0 0.0
  %5018 = vmatpush1.msra.mxu0 0.0
  %5019 = vmatprep.subr.mxu0 0.0
  %5020 = vmatpush1.msra.mxu0 0.0
  %5021 = vmatprep.subr.mxu0 0.0
  %5022 = vmatpush1.msra.mxu0 0.0
  %5023 = vmatprep.subr.mxu0 0.0
  %5024 = vmatpush1.msra.mxu0 0.0
  %5025 = vmatprep.subr.mxu0 0.0
  %5026 = vmatpush1.msra.mxu0 0.0
  %5027 = vmatprep.subr.mxu0 0.0
  %5028 = vmatpush1.msra.mxu0 0.0
  %5029 = vmatprep.subr.mxu0 0.0
  %5030 = vmatpush1.msra.mxu0 0.0
  %5031 = vmatprep.subr.mxu0 0.0
  %5032 = vmatpush1.msra.mxu0 0.0
  %5033 = vmatprep.subr.mxu0 0.0
  %5034 = vmatpush1.msra.mxu0 0.0
  %5035 = vmatprep.subr.mxu0 0.0
  %5036 = vmatpush1.msra.mxu0 0.0
  %5037 = vmatprep.subr.mxu0 0.0
  %5038 = vmatpush1.msra.mxu0 0.0
  %5039 = vmatprep.subr.mxu0 0.0
  %5040 = vmatpush1.msra.mxu0 0.0
  %5041 = vmatprep.subr.mxu0 0.0
  %5042 = vmatpush1.msra.mxu0 0.0
  %5043 = vmatprep.subr.mxu0 0.0
  %5044 = vmatpush1.msra.mxu0 0.0
  %5045 = vmatprep.subr.mxu0 0.0
  %5046 = vmatpush1.msra.mxu0 0.0
  %5047 = vmatprep.subr.mxu0 0.0
  %5048 = vmatpush1.msra.mxu0 0.0
  %5049 = vmatprep.subr.mxu0 0.0
  %5050 = vmatpush1.msra.mxu0 0.0
  %5051 = vmatprep.mubr.f32.mxu0 0.0
  %5052 = vmatmul.mubr.f32.gmra.mrb[0].mxu0 %v4838
  %v5053 = vpop.f32.mrb[0].mxu0
  %v5054 = vadd.f32 0.0, %v5053
  %v5055 = vpop.f32.mrb[0].mxu0
  %v5056 = vadd.f32 0.0, %v5055
  %5057 = vdwg.mxu0
  %5058 = vmatprep.subr.mxu0 %v4850
  %5059 = vmatpush1.msra.mxu0 %v4848
  %5060 = vmatprep.subr.mxu0 0.0
  %5061 = vmatpush1.msra.mxu0 0.0
  %5062 = vmatprep.subr.mxu0 0.0
  %5063 = vmatpush1.msra.mxu0 0.0
  %5064 = vmatprep.subr.mxu0 0.0
  %5065 = vmatpush1.msra.mxu0 0.0
  %5066 = vmatprep.subr.mxu0 0.0
  %5067 = vmatpush1.msra.mxu0 0.0
  %5068 = vmatprep.subr.mxu0 0.0
  %5069 = vmatpush1.msra.mxu0 0.0
  %5070 = vmatprep.subr.mxu0 0.0
  %5071 = vmatpush1.msra.mxu0 0.0
  %5072 = vmatprep.subr.mxu0 0.0
  %5073 = vmatpush1.msra.mxu0 0.0
  %5074 = vmatprep.subr.mxu0 0.0
  %5075 = vmatpush1.msra.mxu0 0.0
  %5076 = vmatprep.subr.mxu0 0.0
  %5077 = vmatpush1.msra.mxu0 0.0
  %5078 = vmatprep.subr.mxu0 0.0
  %5079 = vmatpush1.msra.mxu0 0.0
  %5080 = vmatprep.subr.mxu0 0.0
  %5081 = vmatpush1.msra.mxu0 0.0
  %5082 = vmatprep.subr.mxu0 0.0
  %5083 = vmatpush1.msra.mxu0 0.0
  %5084 = vmatprep.subr.mxu0 0.0
  %5085 = vmatpush1.msra.mxu0 0.0
  %5086 = vmatprep.subr.mxu0 0.0
  %5087 = vmatpush1.msra.mxu0 0.0
  %5088 = vmatprep.subr.mxu0 0.0
  %5089 = vmatpush1.msra.mxu0 0.0
  %5090 = vmatprep.subr.mxu0 0.0
  %5091 = vmatpush1.msra.mxu0 0.0
  %5092 = vmatprep.subr.mxu0 0.0
  %5093 = vmatpush1.msra.mxu0 0.0
  %5094 = vmatprep.subr.mxu0 0.0
  %5095 = vmatpush1.msra.mxu0 0.0
  %5096 = vmatprep.subr.mxu0 0.0
  %5097 = vmatpush1.msra.mxu0 0.0
  %5098 = vmatprep.subr.mxu0 0.0
  %5099 = vmatpush1.msra.mxu0 0.0
  %5100 = vmatprep.subr.mxu0 0.0
  %5101 = vmatpush1.msra.mxu0 0.0
  %5102 = vmatprep.subr.mxu0 0.0
  %5103 = vmatpush1.msra.mxu0 0.0
  %5104 = vmatprep.subr.mxu0 0.0
  %5105 = vmatpush1.msra.mxu0 0.0
  %5106 = vmatprep.subr.mxu0 0.0
  %5107 = vmatpush1.msra.mxu0 0.0
  %5108 = vmatprep.subr.mxu0 0.0
  %5109 = vmatpush1.msra.mxu0 0.0
  %5110 = vmatprep.subr.mxu0 0.0
  %5111 = vmatpush1.msra.mxu0 0.0
  %5112 = vmatprep.subr.mxu0 0.0
  %5113 = vmatpush1.msra.mxu0 0.0
  %5114 = vmatprep.subr.mxu0 0.0
  %5115 = vmatpush1.msra.mxu0 0.0
  %5116 = vmatprep.subr.mxu0 0.0
  %5117 = vmatpush1.msra.mxu0 0.0
  %5118 = vmatprep.subr.mxu0 0.0
  %5119 = vmatpush1.msra.mxu0 0.0
  %5120 = vmatprep.subr.mxu0 0.0
  %5121 = vmatpush1.msra.mxu0 0.0
  %5122 = vmatprep.mubr.f32.mxu0 0.0
  %5123 = vmatmul.mubr.f32.gmra.mrb[0].mxu0 %v4838
  %v5124 = vpop.f32.mrb[0].mxu0
  %v5125 = vadd.f32 0.0, %v5124
  %v5126 = vpop.f32.mrb[0].mxu0
  %v5127 = vadd.f32 0.0, %v5126
  %5128 = vdwg.mxu0
  %5129 = vmatprep.subr.mxu0 %v4854
  %5130 = vmatpush1.msra.mxu0 %v4852
  %5131 = vmatprep.subr.mxu0 0.0
  %5132 = vmatpush1.msra.mxu0 0.0
  %5133 = vmatprep.subr.mxu0 0.0
  %5134 = vmatpush1.msra.mxu0 0.0
  %5135 = vmatprep.subr.mxu0 0.0
  %5136 = vmatpush1.msra.mxu0 0.0
  %5137 = vmatprep.subr.mxu0 0.0
  %5138 = vmatpush1.msra.mxu0 0.0
  %5139 = vmatprep.subr.mxu0 0.0
  %5140 = vmatpush1.msra.mxu0 0.0
  %5141 = vmatprep.subr.mxu0 0.0
  %5142 = vmatpush1.msra.mxu0 0.0
  %5143 = vmatprep.subr.mxu0 0.0
  %5144 = vmatpush1.msra.mxu0 0.0
  %5145 = vmatprep.subr.mxu0 0.0
  %5146 = vmatpush1.msra.mxu0 0.0
  %5147 = vmatprep.subr.mxu0 0.0
  %5148 = vmatpush1.msra.mxu0 0.0
  %5149 = vmatprep.subr.mxu0 0.0
  %5150 = vmatpush1.msra.mxu0 0.0
  %5151 = vmatprep.subr.mxu0 0.0
  %5152 = vmatpush1.msra.mxu0 0.0
  %5153 = vmatprep.subr.mxu0 0.0
  %5154 = vmatpush1.msra.mxu0 0.0
  %5155 = vmatprep.subr.mxu0 0.0
  %5156 = vmatpush1.msra.mxu0 0.0
  %5157 = vmatprep.subr.mxu0 0.0
  %5158 = vmatpush1.msra.mxu0 0.0
  %5159 = vmatprep.subr.mxu0 0.0
  %5160 = vmatpush1.msra.mxu0 0.0
  %5161 = vmatprep.subr.mxu0 0.0
  %5162 = vmatpush1.msra.mxu0 0.0
  %5163 = vmatprep.subr.mxu0 0.0
  %5164 = vmatpush1.msra.mxu0 0.0
  %5165 = vmatprep.subr.mxu0 0.0
  %5166 = vmatpush1.msra.mxu0 0.0
  %5167 = vmatprep.subr.mxu0 0.0
  %5168 = vmatpush1.msra.mxu0 0.0
  %5169 = vmatprep.subr.mxu0 0.0
  %5170 = vmatpush1.msra.mxu0 0.0
  %5171 = vmatprep.subr.mxu0 0.0
  %5172 = vmatpush1.msra.mxu0 0.0
  %5173 = vmatprep.subr.mxu0 0.0
  %5174 = vmatpush1.msra.mxu0 0.0
  %5175 = vmatprep.subr.mxu0 0.0
  %5176 = vmatpush1.msra.mxu0 0.0
  %5177 = vmatprep.subr.mxu0 0.0
  %5178 = vmatpush1.msra.mxu0 0.0
  %5179 = vmatprep.subr.mxu0 0.0
  %5180 = vmatpush1.msra.mxu0 0.0
  %5181 = vmatprep.subr.mxu0 0.0
  %5182 = vmatpush1.msra.mxu0 0.0
  %5183 = vmatprep.subr.mxu0 0.0
  %5184 = vmatpush1.msra.mxu0 0.0
  %5185 = vmatprep.subr.mxu0 0.0
  %5186 = vmatpush1.msra.mxu0 0.0
  %5187 = vmatprep.subr.mxu0 0.0
  %5188 = vmatpush1.msra.mxu0 0.0
  %5189 = vmatprep.subr.mxu0 0.0
  %5190 = vmatpush1.msra.mxu0 0.0
  %5191 = vmatprep.subr.mxu0 0.0
  %5192 = vmatpush1.msra.mxu0 0.0
  %5193 = vmatprep.mubr.f32.mxu0 0.0
  %5194 = vmatmul.mubr.f32.gmra.mrb[0].mxu0 %v4838
  %v5195 = vpop.f32.mrb[0].mxu0
  %v5196 = vadd.f32 0.0, %v5195
  %v5197 = vpop.f32.mrb[0].mxu0
  %v5198 = vadd.f32 0.0, %v5197
  %5199 = vdwg.mxu0
  %5200 = vmatprep.subr.mxu0 %v4858
  %5201 = vmatpush1.msra.mxu0 %v4856
  %5202 = vmatprep.subr.mxu0 0.0
  %5203 = vmatpush1.msra.mxu0 0.0
  %5204 = vmatprep.subr.mxu0 0.0
  %5205 = vmatpush1.msra.mxu0 0.0
  %5206 = vmatprep.subr.mxu0 0.0
  %5207 = vmatpush1.msra.mxu0 0.0
  %5208 = vmatprep.subr.mxu0 0.0
  %5209 = vmatpush1.msra.mxu0 0.0
  %5210 = vmatprep.subr.mxu0 0.0
  %5211 = vmatpush1.msra.mxu0 0.0
  %5212 = vmatprep.subr.mxu0 0.0
  %5213 = vmatpush1.msra.mxu0 0.0
  %5214 = vmatprep.subr.mxu0 0.0
  %5215 = vmatpush1.msra.mxu0 0.0
  %5216 = vmatprep.subr.mxu0 0.0
  %5217 = vmatpush1.msra.mxu0 0.0
  %5218 = vmatprep.subr.mxu0 0.0
  %5219 = vmatpush1.msra.mxu0 0.0
  %5220 = vmatprep.subr.mxu0 0.0
  %5221 = vmatpush1.msra.mxu0 0.0
  %5222 = vmatprep.subr.mxu0 0.0
  %5223 = vmatpush1.msra.mxu0 0.0
  %5224 = vmatprep.subr.mxu0 0.0
  %5225 = vmatpush1.msra.mxu0 0.0
  %5226 = vmatprep.subr.mxu0 0.0
  %5227 = vmatpush1.msra.mxu0 0.0
  %5228 = vmatprep.subr.mxu0 0.0
  %5229 = vmatpush1.msra.mxu0 0.0
  %5230 = vmatprep.subr.mxu0 0.0
  %5231 = vmatpush1.msra.mxu0 0.0
  %5232 = vmatprep.subr.mxu0 0.0
  %5233 = vmatpush1.msra.mxu0 0.0
  %5234 = vmatprep.subr.mxu0 0.0
  %5235 = vmatpush1.msra.mxu0 0.0
  %5236 = vmatprep.subr.mxu0 0.0
  %5237 = vmatpush1.msra.mxu0 0.0
  %5238 = vmatprep.subr.mxu0 0.0
  %5239 = vmatpush1.msra.mxu0 0.0
  %5240 = vmatprep.subr.mxu0 0.0
  %5241 = vmatpush1.msra.mxu0 0.0
  %5242 = vmatprep.subr.mxu0 0.0
  %5243 = vmatpush1.msra.mxu0 0.0
  %5244 = vmatprep.subr.mxu0 0.0
  %5245 = vmatpush1.msra.mxu0 0.0
  %5246 = vmatprep.subr.mxu0 0.0
  %5247 = vmatpush1.msra.mxu0 0.0
  %5248 = vmatprep.subr.mxu0 0.0
  %5249 = vmatpush1.msra.mxu0 0.0
  %5250 = vmatprep.subr.mxu0 0.0
  %5251 = vmatpush1.msra.mxu0 0.0
  %5252 = vmatprep.subr.mxu0 0.0
  %5253 = vmatpush1.msra.mxu0 0.0
  %5254 = vmatprep.subr.mxu0 0.0
  %5255 = vmatpush1.msra.mxu0 0.0
  %5256 = vmatprep.subr.mxu0 0.0
  %5257 = vmatpush1.msra.mxu0 0.0
  %5258 = vmatprep.subr.mxu0 0.0
  %5259 = vmatpush1.msra.mxu0 0.0
  %5260 = vmatprep.subr.mxu0 0.0
  %5261 = vmatpush1.msra.mxu0 0.0
  %5262 = vmatprep.subr.mxu0 0.0
  %5263 = vmatpush1.msra.mxu0 0.0
  %5264 = vmatprep.mubr.f32.mxu0 0.0
  %5265 = vmatmul.mubr.f32.gmra.mrb[0].mxu0 %v4838
  %v5266 = vpop.f32.mrb[0].mxu0
  %v5267 = vadd.f32 0.0, %v5266
  %v5268 = vpop.f32.mrb[0].mxu0
  %v5269 = vadd.f32 0.0, %v5268
  %5270 = vdwg.mxu0
  %5271 = vmatprep.subr.mxu0 %v4862
  %5272 = vmatpush1.msra.mxu0 %v4860
  %5273 = vmatprep.subr.mxu0 0.0
  %5274 = vmatpush1.msra.mxu0 0.0
  %5275 = vmatprep.subr.mxu0 0.0
  %5276 = vmatpush1.msra.mxu0 0.0
  %5277 = vmatprep.subr.mxu0 0.0
  %5278 = vmatpush1.msra.mxu0 0.0
  %5279 = vmatprep.subr.mxu0 0.0
  %5280 = vmatpush1.msra.mxu0 0.0
  %5281 = vmatprep.subr.mxu0 0.0
  %5282 = vmatpush1.msra.mxu0 0.0
  %5283 = vmatprep.subr.mxu0 0.0
  %5284 = vmatpush1.msra.mxu0 0.0
  %5285 = vmatprep.subr.mxu0 0.0
  %5286 = vmatpush1.msra.mxu0 0.0
  %5287 = vmatprep.subr.mxu0 0.0
  %5288 = vmatpush1.msra.mxu0 0.0
  %5289 = vmatprep.subr.mxu0 0.0
  %5290 = vmatpush1.msra.mxu0 0.0
  %5291 = vmatprep.subr.mxu0 0.0
  %5292 = vmatpush1.msra.mxu0 0.0
  %5293 = vmatprep.subr.mxu0 0.0
  %5294 = vmatpush1.msra.mxu0 0.0
  %5295 = vmatprep.subr.mxu0 0.0
  %5296 = vmatpush1.msra.mxu0 0.0
  %5297 = vmatprep.subr.mxu0 0.0
  %5298 = vmatpush1.msra.mxu0 0.0
  %5299 = vmatprep.subr.mxu0 0.0
  %5300 = vmatpush1.msra.mxu0 0.0
  %5301 = vmatprep.subr.mxu0 0.0
  %5302 = vmatpush1.msra.mxu0 0.0
  %5303 = vmatprep.subr.mxu0 0.0
  %5304 = vmatpush1.msra.mxu0 0.0
  %5305 = vmatprep.subr.mxu0 0.0
  %5306 = vmatpush1.msra.mxu0 0.0
  %5307 = vmatprep.subr.mxu0 0.0
  %5308 = vmatpush1.msra.mxu0 0.0
  %5309 = vmatprep.subr.mxu0 0.0
  %5310 = vmatpush1.msra.mxu0 0.0
  %5311 = vmatprep.subr.mxu0 0.0
  %5312 = vmatpush1.msra.mxu0 0.0
  %5313 = vmatprep.subr.mxu0 0.0
  %5314 = vmatpush1.msra.mxu0 0.0
  %5315 = vmatprep.subr.mxu0 0.0
  %5316 = vmatpush1.msra.mxu0 0.0
  %5317 = vmatprep.subr.mxu0 0.0
  %5318 = vmatpush1.msra.mxu0 0.0
  %5319 = vmatprep.subr.mxu0 0.0
  %5320 = vmatpush1.msra.mxu0 0.0
  %5321 = vmatprep.subr.mxu0 0.0
  %5322 = vmatpush1.msra.mxu0 0.0
  %5323 = vmatprep.subr.mxu0 0.0
  %5324 = vmatpush1.msra.mxu0 0.0
  %5325 = vmatprep.subr.mxu0 0.0
  %5326 = vmatpush1.msra.mxu0 0.0
  %5327 = vmatprep.subr.mxu0 0.0
  %5328 = vmatpush1.msra.mxu0 0.0
  %5329 = vmatprep.subr.mxu0 0.0
  %5330 = vmatpush1.msra.mxu0 0.0
  %5331 = vmatprep.subr.mxu0 0.0
  %5332 = vmatpush1.msra.mxu0 0.0
  %5333 = vmatprep.subr.mxu0 0.0
  %5334 = vmatpush1.msra.mxu0 0.0
  %5335 = vmatprep.mubr.f32.mxu0 0.0
  %5336 = vmatmul.mubr.f32.gmra.mrb[0].mxu0 %v4838
  %v5337 = vpop.f32.mrb[0].mxu0
  %v5338 = vadd.f32 0.0, %v5337
  %v5339 = vpop.f32.mrb[0].mxu0
  %v5340 = vadd.f32 0.0, %v5339
  %5341 = vdwg.mxu0
  %5342 = vmatprep.subr.mxu0 %v4866
  %5343 = vmatpush1.msra.mxu0 %v4864
  %5344 = vmatprep.subr.mxu0 0.0
  %5345 = vmatpush1.msra.mxu0 0.0
  %5346 = vmatprep.subr.mxu0 0.0
  %5347 = vmatpush1.msra.mxu0 0.0
  %5348 = vmatprep.subr.mxu0 0.0
  %5349 = vmatpush1.msra.mxu0 0.0
  %5350 = vmatprep.subr.mxu0 0.0
  %5351 = vmatpush1.msra.mxu0 0.0
  %5352 = vmatprep.subr.mxu0 0.0
  %5353 = vmatpush1.msra.mxu0 0.0
  %5354 = vmatprep.subr.mxu0 0.0
  %5355 = vmatpush1.msra.mxu0 0.0
  %5356 = vmatprep.subr.mxu0 0.0
  %5357 = vmatpush1.msra.mxu0 0.0
  %5358 = vmatprep.subr.mxu0 0.0
  %5359 = vmatpush1.msra.mxu0 0.0
  %5360 = vmatprep.subr.mxu0 0.0
  %5361 = vmatpush1.msra.mxu0 0.0
  %5362 = vmatprep.subr.mxu0 0.0
  %5363 = vmatpush1.msra.mxu0 0.0
  %5364 = vmatprep.subr.mxu0 0.0
  %5365 = vmatpush1.msra.mxu0 0.0
  %5366 = vmatprep.subr.mxu0 0.0
  %5367 = vmatpush1.msra.mxu0 0.0
  %5368 = vmatprep.subr.mxu0 0.0
  %5369 = vmatpush1.msra.mxu0 0.0
  %5370 = vmatprep.subr.mxu0 0.0
  %5371 = vmatpush1.msra.mxu0 0.0
  %5372 = vmatprep.subr.mxu0 0.0
  %5373 = vmatpush1.msra.mxu0 0.0
  %5374 = vmatprep.subr.mxu0 0.0
  %5375 = vmatpush1.msra.mxu0 0.0
  %5376 = vmatprep.subr.mxu0 0.0
  %5377 = vmatpush1.msra.mxu0 0.0
  %5378 = vmatprep.subr.mxu0 0.0
  %5379 = vmatpush1.msra.mxu0 0.0
  %5380 = vmatprep.subr.mxu0 0.0
  %5381 = vmatpush1.msra.mxu0 0.0
  %5382 = vmatprep.subr.mxu0 0.0
  %5383 = vmatpush1.msra.mxu0 0.0
  %5384 = vmatprep.subr.mxu0 0.0
  %5385 = vmatpush1.msra.mxu0 0.0
  %5386 = vmatprep.subr.mxu0 0.0
  %5387 = vmatpush1.msra.mxu0 0.0
  %5388 = vmatprep.subr.mxu0 0.0
  %5389 = vmatpush1.msra.mxu0 0.0
  %5390 = vmatprep.subr.mxu0 0.0
  %5391 = vmatpush1.msra.mxu0 0.0
  %5392 = vmatprep.subr.mxu0 0.0
  %5393 = vmatpush1.msra.mxu0 0.0
  %5394 = vmatprep.subr.mxu0 0.0
  %5395 = vmatpush1.msra.mxu0 0.0
  %5396 = vmatprep.subr.mxu0 0.0
  %5397 = vmatpush1.msra.mxu0 0.0
  %5398 = vmatprep.subr.mxu0 0.0
  %5399 = vmatpush1.msra.mxu0 0.0
  %5400 = vmatprep.subr.mxu0 0.0
  %5401 = vmatpush1.msra.mxu0 0.0
  %5402 = vmatprep.subr.mxu0 0.0
  %5403 = vmatpush1.msra.mxu0 0.0
  %5404 = vmatprep.subr.mxu0 0.0
  %5405 = vmatpush1.msra.mxu0 0.0
  %5406 = vmatprep.mubr.f32.mxu0 0.0
  %5407 = vmatmul.mubr.f32.gmra.mrb[0].mxu0 %v4838
  %v5408 = vpop.f32.mrb[0].mxu0
  %v5409 = vadd.f32 0.0, %v5408
  %v5410 = vpop.f32.mrb[0].mxu0
  %v5411 = vadd.f32 0.0, %v5410
  %5412 = vdwg.mxu0
  %5413 = vmatprep.subr.mxu0 %v4870
  %5414 = vmatpush1.msra.mxu0 %v4868
  %5415 = vmatprep.subr.mxu0 0.0
  %5416 = vmatpush1.msra.mxu0 0.0
  %5417 = vmatprep.subr.mxu0 0.0
  %5418 = vmatpush1.msra.mxu0 0.0
  %5419 = vmatprep.subr.mxu0 0.0
  %5420 = vmatpush1.msra.mxu0 0.0
  %5421 = vmatprep.subr.mxu0 0.0
  %5422 = vmatpush1.msra.mxu0 0.0
  %5423 = vmatprep.subr.mxu0 0.0
  %5424 = vmatpush1.msra.mxu0 0.0
  %5425 = vmatprep.subr.mxu0 0.0
  %5426 = vmatpush1.msra.mxu0 0.0
  %5427 = vmatprep.subr.mxu0 0.0
  %5428 = vmatpush1.msra.mxu0 0.0
  %5429 = vmatprep.subr.mxu0 0.0
  %5430 = vmatpush1.msra.mxu0 0.0
  %5431 = vmatprep.subr.mxu0 0.0
  %5432 = vmatpush1.msra.mxu0 0.0
  %5433 = vmatprep.subr.mxu0 0.0
  %5434 = vmatpush1.msra.mxu0 0.0
  %5435 = vmatprep.subr.mxu0 0.0
  %5436 = vmatpush1.msra.mxu0 0.0
  %5437 = vmatprep.subr.mxu0 0.0
  %5438 = vmatpush1.msra.mxu0 0.0
  %5439 = vmatprep.subr.mxu0 0.0
  %5440 = vmatpush1.msra.mxu0 0.0
  %5441 = vmatprep.subr.mxu0 0.0
  %5442 = vmatpush1.msra.mxu0 0.0
  %5443 = vmatprep.subr.mxu0 0.0
  %5444 = vmatpush1.msra.mxu0 0.0
  %5445 = vmatprep.subr.mxu0 0.0
  %5446 = vmatpush1.msra.mxu0 0.0
  %5447 = vmatprep.subr.mxu0 0.0
  %5448 = vmatpush1.msra.mxu0 0.0
  %5449 = vmatprep.subr.mxu0 0.0
  %5450 = vmatpush1.msra.mxu0 0.0
  %5451 = vmatprep.subr.mxu0 0.0
  %5452 = vmatpush1.msra.mxu0 0.0
  %5453 = vmatprep.subr.mxu0 0.0
  %5454 = vmatpush1.msra.mxu0 0.0
  %5455 = vmatprep.subr.mxu0 0.0
  %5456 = vmatpush1.msra.mxu0 0.0
  %5457 = vmatprep.subr.mxu0 0.0
  %5458 = vmatpush1.msra.mxu0 0.0
  %5459 = vmatprep.subr.mxu0 0.0
  %5460 = vmatpush1.msra.mxu0 0.0
  %5461 = vmatprep.subr.mxu0 0.0
  %5462 = vmatpush1.msra.mxu0 0.0
  %5463 = vmatprep.subr.mxu0 0.0
  %5464 = vmatpush1.msra.mxu0 0.0
  %5465 = vmatprep.subr.mxu0 0.0
  %5466 = vmatpush1.msra.mxu0 0.0
  %5467 = vmatprep.subr.mxu0 0.0
  %5468 = vmatpush1.msra.mxu0 0.0
  %5469 = vmatprep.subr.mxu0 0.0
  %5470 = vmatpush1.msra.mxu0 0.0
  %5471 = vmatprep.subr.mxu0 0.0
  %5472 = vmatpush1.msra.mxu0 0.0
  %5473 = vmatprep.subr.mxu0 0.0
  %5474 = vmatpush1.msra.mxu0 0.0
  %5475 = vmatprep.subr.mxu0 0.0
  %5476 = vmatpush1.msra.mxu0 0.0
  %5477 = vmatprep.mubr.f32.mxu0 0.0
  %5478 = vmatmul.mubr.f32.gmra.mrb[0].mxu0 %v4838
  %v5479 = vpop.f32.mrb[0].mxu0
  %v5480 = vadd.f32 0.0, %v5479
  %v5481 = vpop.f32.mrb[0].mxu0
  %v5482 = vadd.f32 0.0, %v5481
  %5483 = vdwg.mxu0
  %5484 = vmatprep.subr.mxu0 %v4874
  %5485 = vmatpush1.msra.mxu0 %v4872
  %5486 = vmatprep.subr.mxu0 0.0
  %5487 = vmatpush1.msra.mxu0 0.0
  %5488 = vmatprep.subr.mxu0 0.0
  %5489 = vmatpush1.msra.mxu0 0.0
  %5490 = vmatprep.subr.mxu0 0.0
  %5491 = vmatpush1.msra.mxu0 0.0
  %5492 = vmatprep.subr.mxu0 0.0
  %5493 = vmatpush1.msra.mxu0 0.0
  %5494 = vmatprep.subr.mxu0 0.0
  %5495 = vmatpush1.msra.mxu0 0.0
  %5496 = vmatprep.subr.mxu0 0.0
  %5497 = vmatpush1.msra.mxu0 0.0
  %5498 = vmatprep.subr.mxu0 0.0
  %5499 = vmatpush1.msra.mxu0 0.0
  %5500 = vmatprep.subr.mxu0 0.0
  %5501 = vmatpush1.msra.mxu0 0.0
  %5502 = vmatprep.subr.mxu0 0.0
  %5503 = vmatpush1.msra.mxu0 0.0
  %5504 = vmatprep.subr.mxu0 0.0
  %5505 = vmatpush1.msra.mxu0 0.0
  %5506 = vmatprep.subr.mxu0 0.0
  %5507 = vmatpush1.msra.mxu0 0.0
  %5508 = vmatprep.subr.mxu0 0.0
  %5509 = vmatpush1.msra.mxu0 0.0
  %5510 = vmatprep.subr.mxu0 0.0
  %5511 = vmatpush1.msra.mxu0 0.0
  %5512 = vmatprep.subr.mxu0 0.0
  %5513 = vmatpush1.msra.mxu0 0.0
  %5514 = vmatprep.subr.mxu0 0.0
  %5515 = vmatpush1.msra.mxu0 0.0
  %5516 = vmatprep.subr.mxu0 0.0
  %5517 = vmatpush1.msra.mxu0 0.0
  %5518 = vmatprep.subr.mxu0 0.0
  %5519 = vmatpush1.msra.mxu0 0.0
  %5520 = vmatprep.subr.mxu0 0.0
  %5521 = vmatpush1.msra.mxu0 0.0
  %5522 = vmatprep.subr.mxu0 0.0
  %5523 = vmatpush1.msra.mxu0 0.0
  %5524 = vmatprep.subr.mxu0 0.0
  %5525 = vmatpush1.msra.mxu0 0.0
  %5526 = vmatprep.subr.mxu0 0.0
  %5527 = vmatpush1.msra.mxu0 0.0
  %5528 = vmatprep.subr.mxu0 0.0
  %5529 = vmatpush1.msra.mxu0 0.0
  %5530 = vmatprep.subr.mxu0 0.0
  %5531 = vmatpush1.msra.mxu0 0.0
  %5532 = vmatprep.subr.mxu0 0.0
  %5533 = vmatpush1.msra.mxu0 0.0
  %5534 = vmatprep.subr.mxu0 0.0
  %5535 = vmatpush1.msra.mxu0 0.0
  %5536 = vmatprep.subr.mxu0 0.0
  %5537 = vmatpush1.msra.mxu0 0.0
  %5538 = vmatprep.subr.mxu0 0.0
  %5539 = vmatpush1.msra.mxu0 0.0
  %5540 = vmatprep.subr.mxu0 0.0
  %5541 = vmatpush1.msra.mxu0 0.0
  %5542 = vmatprep.subr.mxu0 0.0
  %5543 = vmatpush1.msra.mxu0 0.0
  %5544 = vmatprep.subr.mxu0 0.0
  %5545 = vmatpush1.msra.mxu0 0.0
  %5546 = vmatprep.subr.mxu0 0.0
  %5547 = vmatpush1.msra.mxu0 0.0
  %5548 = vmatprep.mubr.f32.mxu0 0.0
  %5549 = vmatmul.mubr.f32.gmra.mrb[0].mxu0 %v4838
  %v5550 = vpop.f32.mrb[0].mxu0
  %v5551 = vadd.f32 0.0, %v5550
  %v5552 = vpop.f32.mrb[0].mxu0
  %v5553 = vadd.f32 0.0, %v5552
  %5554 = vdwg.mxu0
  %5555 = vmatprep.subr.mxu0 %v4878
  %5556 = vmatpush1.msra.mxu0 %v4876
  %5557 = vmatprep.subr.mxu0 0.0
  %5558 = vmatpush1.msra.mxu0 0.0
  %5559 = vmatprep.subr.mxu0 0.0
  %5560 = vmatpush1.msra.mxu0 0.0
  %5561 = vmatprep.subr.mxu0 0.0
  %5562 = vmatpush1.msra.mxu0 0.0
  %5563 = vmatprep.subr.mxu0 0.0
  %5564 = vmatpush1.msra.mxu0 0.0
  %5565 = vmatprep.subr.mxu0 0.0
  %5566 = vmatpush1.msra.mxu0 0.0
  %5567 = vmatprep.subr.mxu0 0.0
  %5568 = vmatpush1.msra.mxu0 0.0
  %5569 = vmatprep.subr.mxu0 0.0
  %5570 = vmatpush1.msra.mxu0 0.0
  %5571 = vmatprep.subr.mxu0 0.0
  %5572 = vmatpush1.msra.mxu0 0.0
  %5573 = vmatprep.subr.mxu0 0.0
  %5574 = vmatpush1.msra.mxu0 0.0
  %5575 = vmatprep.subr.mxu0 0.0
  %5576 = vmatpush1.msra.mxu0 0.0
  %5577 = vmatprep.subr.mxu0 0.0
  %5578 = vmatpush1.msra.mxu0 0.0
  %5579 = vmatprep.subr.mxu0 0.0
  %5580 = vmatpush1.msra.mxu0 0.0
  %5581 = vmatprep.subr.mxu0 0.0
  %5582 = vmatpush1.msra.mxu0 0.0
  %5583 = vmatprep.subr.mxu0 0.0
  %5584 = vmatpush1.msra.mxu0 0.0
  %5585 = vmatprep.subr.mxu0 0.0
  %5586 = vmatpush1.msra.mxu0 0.0
  %5587 = vmatprep.subr.mxu0 0.0
  %5588 = vmatpush1.msra.mxu0 0.0
  %5589 = vmatprep.subr.mxu0 0.0
  %5590 = vmatpush1.msra.mxu0 0.0
  %5591 = vmatprep.subr.mxu0 0.0
  %5592 = vmatpush1.msra.mxu0 0.0
  %5593 = vmatprep.subr.mxu0 0.0
  %5594 = vmatpush1.msra.mxu0 0.0
  %5595 = vmatprep.subr.mxu0 0.0
  %5596 = vmatpush1.msra.mxu0 0.0
  %5597 = vmatprep.subr.mxu0 0.0
  %5598 = vmatpush1.msra.mxu0 0.0
  %5599 = vmatprep.subr.mxu0 0.0
  %5600 = vmatpush1.msra.mxu0 0.0
  %5601 = vmatprep.subr.mxu0 0.0
  %5602 = vmatpush1.msra.mxu0 0.0
  %5603 = vmatprep.subr.mxu0 0.0
  %5604 = vmatpush1.msra.mxu0 0.0
  %5605 = vmatprep.subr.mxu0 0.0
  %5606 = vmatpush1.msra.mxu0 0.0
  %5607 = vmatprep.subr.mxu0 0.0
  %5608 = vmatpush1.msra.mxu0 0.0
  %5609 = vmatprep.subr.mxu0 0.0
  %5610 = vmatpush1.msra.mxu0 0.0
  %5611 = vmatprep.subr.mxu0 0.0
  %5612 = vmatpush1.msra.mxu0 0.0
  %5613 = vmatprep.subr.mxu0 0.0
  %5614 = vmatpush1.msra.mxu0 0.0
  %5615 = vmatprep.subr.mxu0 0.0
  %5616 = vmatpush1.msra.mxu0 0.0
  %5617 = vmatprep.subr.mxu0 0.0
  %5618 = vmatpush1.msra.mxu0 0.0
  %5619 = vmatprep.mubr.f32.mxu0 0.0
  %5620 = vmatmul.mubr.f32.gmra.mrb[0].mxu0 %v4838
  %v5621 = vpop.f32.mrb[0].mxu0
  %v5622 = vadd.f32 0.0, %v5621
  %v5623 = vpop.f32.mrb[0].mxu0
  %v5624 = vadd.f32 0.0, %v5623
  %5625 = vdwg.mxu0
  %5626 = vmatprep.subr.mxu0 %v4882
  %5627 = vmatpush1.msra.mxu0 %v4880
  %5628 = vmatprep.subr.mxu0 0.0
  %5629 = vmatpush1.msra.mxu0 0.0
  %5630 = vmatprep.subr.mxu0 0.0
  %5631 = vmatpush1.msra.mxu0 0.0
  %5632 = vmatprep.subr.mxu0 0.0
  %5633 = vmatpush1.msra.mxu0 0.0
  %5634 = vmatprep.subr.mxu0 0.0
  %5635 = vmatpush1.msra.mxu0 0.0
  %5636 = vmatprep.subr.mxu0 0.0
  %5637 = vmatpush1.msra.mxu0 0.0
  %5638 = vmatprep.subr.mxu0 0.0
  %5639 = vmatpush1.msra.mxu0 0.0
  %5640 = vmatprep.subr.mxu0 0.0
  %5641 = vmatpush1.msra.mxu0 0.0
  %5642 = vmatprep.subr.mxu0 0.0
  %5643 = vmatpush1.msra.mxu0 0.0
  %5644 = vmatprep.subr.mxu0 0.0
  %5645 = vmatpush1.msra.mxu0 0.0
  %5646 = vmatprep.subr.mxu0 0.0
  %5647 = vmatpush1.msra.mxu0 0.0
  %5648 = vmatprep.subr.mxu0 0.0
  %5649 = vmatpush1.msra.mxu0 0.0
  %5650 = vmatprep.subr.mxu0 0.0
  %5651 = vmatpush1.msra.mxu0 0.0
  %5652 = vmatprep.subr.mxu0 0.0
  %5653 = vmatpush1.msra.mxu0 0.0
  %5654 = vmatprep.subr.mxu0 0.0
  %5655 = vmatpush1.msra.mxu0 0.0
  %5656 = vmatprep.subr.mxu0 0.0
  %5657 = vmatpush1.msra.mxu0 0.0
  %5658 = vmatprep.subr.mxu0 0.0
  %5659 = vmatpush1.msra.mxu0 0.0
  %5660 = vmatprep.subr.mxu0 0.0
  %5661 = vmatpush1.msra.mxu0 0.0
  %5662 = vmatprep.subr.mxu0 0.0
  %5663 = vmatpush1.msra.mxu0 0.0
  %5664 = vmatprep.subr.mxu0 0.0
  %5665 = vmatpush1.msra.mxu0 0.0
  %5666 = vmatprep.subr.mxu0 0.0
  %5667 = vmatpush1.msra.mxu0 0.0
  %5668 = vmatprep.subr.mxu0 0.0
  %5669 = vmatpush1.msra.mxu0 0.0
  %5670 = vmatprep.subr.mxu0 0.0
  %5671 = vmatpush1.msra.mxu0 0.0
  %5672 = vmatprep.subr.mxu0 0.0
  %5673 = vmatpush1.msra.mxu0 0.0
  %5674 = vmatprep.subr.mxu0 0.0
  %5675 = vmatpush1.msra.mxu0 0.0
  %5676 = vmatprep.subr.mxu0 0.0
  %5677 = vmatpush1.msra.mxu0 0.0
  %5678 = vmatprep.subr.mxu0 0.0
  %5679 = vmatpush1.msra.mxu0 0.0
  %5680 = vmatprep.subr.mxu0 0.0
  %5681 = vmatpush1.msra.mxu0 0.0
  %5682 = vmatprep.subr.mxu0 0.0
  %5683 = vmatpush1.msra.mxu0 0.0
  %5684 = vmatprep.subr.mxu0 0.0
  %5685 = vmatpush1.msra.mxu0 0.0
  %5686 = vmatprep.subr.mxu0 0.0
  %5687 = vmatpush1.msra.mxu0 0.0
  %5688 = vmatprep.subr.mxu0 0.0
  %5689 = vmatpush1.msra.mxu0 0.0
  %5690 = vmatprep.mubr.f32.mxu0 0.0
  %5691 = vmatmul.mubr.f32.gmra.mrb[0].mxu0 %v4838
  %v5692 = vpop.f32.mrb[0].mxu0
  %v5693 = vadd.f32 0.0, %v5692
  %v5694 = vpop.f32.mrb[0].mxu0
  %v5695 = vadd.f32 0.0, %v5694
  %5696 = vdwg.mxu0
  %5697 = vmatprep.subr.mxu0 %v4886
  %5698 = vmatpush1.msra.mxu0 %v4884
  %5699 = vmatprep.subr.mxu0 0.0
  %5700 = vmatpush1.msra.mxu0 0.0
  %5701 = vmatprep.subr.mxu0 0.0
  %5702 = vmatpush1.msra.mxu0 0.0
  %5703 = vmatprep.subr.mxu0 0.0
  %5704 = vmatpush1.msra.mxu0 0.0
  %5705 = vmatprep.subr.mxu0 0.0
  %5706 = vmatpush1.msra.mxu0 0.0
  %5707 = vmatprep.subr.mxu0 0.0
  %5708 = vmatpush1.msra.mxu0 0.0
  %5709 = vmatprep.subr.mxu0 0.0
  %5710 = vmatpush1.msra.mxu0 0.0
  %5711 = vmatprep.subr.mxu0 0.0
  %5712 = vmatpush1.msra.mxu0 0.0
  %5713 = vmatprep.subr.mxu0 0.0
  %5714 = vmatpush1.msra.mxu0 0.0
  %5715 = vmatprep.subr.mxu0 0.0
  %5716 = vmatpush1.msra.mxu0 0.0
  %5717 = vmatprep.subr.mxu0 0.0
  %5718 = vmatpush1.msra.mxu0 0.0
  %5719 = vmatprep.subr.mxu0 0.0
  %5720 = vmatpush1.msra.mxu0 0.0
  %5721 = vmatprep.subr.mxu0 0.0
  %5722 = vmatpush1.msra.mxu0 0.0
  %5723 = vmatprep.subr.mxu0 0.0
  %5724 = vmatpush1.msra.mxu0 0.0
  %5725 = vmatprep.subr.mxu0 0.0
  %5726 = vmatpush1.msra.mxu0 0.0
  %5727 = vmatprep.subr.mxu0 0.0
  %5728 = vmatpush1.msra.mxu0 0.0
  %5729 = vmatprep.subr.mxu0 0.0
  %5730 = vmatpush1.msra.mxu0 0.0
  %5731 = vmatprep.subr.mxu0 0.0
  %5732 = vmatpush1.msra.mxu0 0.0
  %5733 = vmatprep.subr.mxu0 0.0
  %5734 = vmatpush1.msra.mxu0 0.0
  %5735 = vmatprep.subr.mxu0 0.0
  %5736 = vmatpush1.msra.mxu0 0.0
  %5737 = vmatprep.subr.mxu0 0.0
  %5738 = vmatpush1.msra.mxu0 0.0
  %5739 = vmatprep.subr.mxu0 0.0
  %5740 = vmatpush1.msra.mxu0 0.0
  %5741 = vmatprep.subr.mxu0 0.0
  %5742 = vmatpush1.msra.mxu0 0.0
  %5743 = vmatprep.subr.mxu0 0.0
  %5744 = vmatpush1.msra.mxu0 0.0
  %5745 = vmatprep.subr.mxu0 0.0
  %5746 = vmatpush1.msra.mxu0 0.0
  %5747 = vmatprep.subr.mxu0 0.0
  %5748 = vmatpush1.msra.mxu0 0.0
  %5749 = vmatprep.subr.mxu0 0.0
  %5750 = vmatpush1.msra.mxu0 0.0
  %5751 = vmatprep.subr.mxu0 0.0
  %5752 = vmatpush1.msra.mxu0 0.0
  %5753 = vmatprep.subr.mxu0 0.0
  %5754 = vmatpush1.msra.mxu0 0.0
  %5755 = vmatprep.subr.mxu0 0.0
  %5756 = vmatpush1.msra.mxu0 0.0
  %5757 = vmatprep.subr.mxu0 0.0
  %5758 = vmatpush1.msra.mxu0 0.0
  %5759 = vmatprep.subr.mxu0 0.0
  %5760 = vmatpush1.msra.mxu0 0.0
  %5761 = vmatprep.mubr.f32.mxu0 0.0
  %5762 = vmatmul.mubr.f32.gmra.mrb[0].mxu0 %v4838
  %v5763 = vpop.f32.mrb[0].mxu0
  %v5764 = vadd.f32 0.0, %v5763
  %v5765 = vpop.f32.mrb[0].mxu0
  %v5766 = vadd.f32 0.0, %v5765
  %5767 = vdwg.mxu0
  %5768 = vmatprep.subr.mxu0 %v4890
  %5769 = vmatpush1.msra.mxu0 %v4888
  %5770 = vmatprep.subr.mxu0 0.0
  %5771 = vmatpush1.msra.mxu0 0.0
  %5772 = vmatprep.subr.mxu0 0.0
  %5773 = vmatpush1.msra.mxu0 0.0
  %5774 = vmatprep.subr.mxu0 0.0
  %5775 = vmatpush1.msra.mxu0 0.0
  %5776 = vmatprep.subr.mxu0 0.0
  %5777 = vmatpush1.msra.mxu0 0.0
  %5778 = vmatprep.subr.mxu0 0.0
  %5779 = vmatpush1.msra.mxu0 0.0
  %5780 = vmatprep.subr.mxu0 0.0
  %5781 = vmatpush1.msra.mxu0 0.0
  %5782 = vmatprep.subr.mxu0 0.0
  %5783 = vmatpush1.msra.mxu0 0.0
  %5784 = vmatprep.subr.mxu0 0.0
  %5785 = vmatpush1.msra.mxu0 0.0
  %5786 = vmatprep.subr.mxu0 0.0
  %5787 = vmatpush1.msra.mxu0 0.0
  %5788 = vmatprep.subr.mxu0 0.0
  %5789 = vmatpush1.msra.mxu0 0.0
  %5790 = vmatprep.subr.mxu0 0.0
  %5791 = vmatpush1.msra.mxu0 0.0
  %5792 = vmatprep.subr.mxu0 0.0
  %5793 = vmatpush1.msra.mxu0 0.0
  %5794 = vmatprep.subr.mxu0 0.0
  %5795 = vmatpush1.msra.mxu0 0.0
  %5796 = vmatprep.subr.mxu0 0.0
  %5797 = vmatpush1.msra.mxu0 0.0
  %5798 = vmatprep.subr.mxu0 0.0
  %5799 = vmatpush1.msra.mxu0 0.0
  %5800 = vmatprep.subr.mxu0 0.0
  %5801 = vmatpush1.msra.mxu0 0.0
  %5802 = vmatprep.subr.mxu0 0.0
  %5803 = vmatpush1.msra.mxu0 0.0
  %5804 = vmatprep.subr.mxu0 0.0
  %5805 = vmatpush1.msra.mxu0 0.0
  %5806 = vmatprep.subr.mxu0 0.0
  %5807 = vmatpush1.msra.mxu0 0.0
  %5808 = vmatprep.subr.mxu0 0.0
  %5809 = vmatpush1.msra.mxu0 0.0
  %5810 = vmatprep.subr.mxu0 0.0
  %5811 = vmatpush1.msra.mxu0 0.0
  %5812 = vmatprep.subr.mxu0 0.0
  %5813 = vmatpush1.msra.mxu0 0.0
  %5814 = vmatprep.subr.mxu0 0.0
  %5815 = vmatpush1.msra.mxu0 0.0
  %5816 = vmatprep.subr.mxu0 0.0
  %5817 = vmatpush1.msra.mxu0 0.0
  %5818 = vmatprep.subr.mxu0 0.0
  %5819 = vmatpush1.msra.mxu0 0.0
  %5820 = vmatprep.subr.mxu0 0.0
  %5821 = vmatpush1.msra.mxu0 0.0
  %5822 = vmatprep.subr.mxu0 0.0
  %5823 = vmatpush1.msra.mxu0 0.0
  %5824 = vmatprep.subr.mxu0 0.0
  %5825 = vmatpush1.msra.mxu0 0.0
  %5826 = vmatprep.subr.mxu0 0.0
  %5827 = vmatpush1.msra.mxu0 0.0
  %5828 = vmatprep.subr.mxu0 0.0
  %5829 = vmatpush1.msra.mxu0 0.0
  %5830 = vmatprep.subr.mxu0 0.0
  %5831 = vmatpush1.msra.mxu0 0.0
  %5832 = vmatprep.mubr.f32.mxu0 0.0
  %5833 = vmatmul.mubr.f32.gmra.mrb[0].mxu0 %v4838
  %v5834 = vpop.f32.mrb[0].mxu0
  %v5835 = vadd.f32 0.0, %v5834
  %v5836 = vpop.f32.mrb[0].mxu0
  %v5837 = vadd.f32 0.0, %v5836
  %5838 = vdwg.mxu0
  %5839 = vmatprep.subr.mxu0 %v4894
  %5840 = vmatpush1.msra.mxu0 %v4892
  %5841 = vmatprep.subr.mxu0 0.0
  %5842 = vmatpush1.msra.mxu0 0.0
  %5843 = vmatprep.subr.mxu0 0.0
  %5844 = vmatpush1.msra.mxu0 0.0
  %5845 = vmatprep.subr.mxu0 0.0
  %5846 = vmatpush1.msra.mxu0 0.0
  %5847 = vmatprep.subr.mxu0 0.0
  %5848 = vmatpush1.msra.mxu0 0.0
  %5849 = vmatprep.subr.mxu0 0.0
  %5850 = vmatpush1.msra.mxu0 0.0
  %5851 = vmatprep.subr.mxu0 0.0
  %5852 = vmatpush1.msra.mxu0 0.0
  %5853 = vmatprep.subr.mxu0 0.0
  %5854 = vmatpush1.msra.mxu0 0.0
  %5855 = vmatprep.subr.mxu0 0.0
  %5856 = vmatpush1.msra.mxu0 0.0
  %5857 = vmatprep.subr.mxu0 0.0
  %5858 = vmatpush1.msra.mxu0 0.0
  %5859 = vmatprep.subr.mxu0 0.0
  %5860 = vmatpush1.msra.mxu0 0.0
  %5861 = vmatprep.subr.mxu0 0.0
  %5862 = vmatpush1.msra.mxu0 0.0
  %5863 = vmatprep.subr.mxu0 0.0
  %5864 = vmatpush1.msra.mxu0 0.0
  %5865 = vmatprep.subr.mxu0 0.0
  %5866 = vmatpush1.msra.mxu0 0.0
  %5867 = vmatprep.subr.mxu0 0.0
  %5868 = vmatpush1.msra.mxu0 0.0
  %5869 = vmatprep.subr.mxu0 0.0
  %5870 = vmatpush1.msra.mxu0 0.0
  %5871 = vmatprep.subr.mxu0 0.0
  %5872 = vmatpush1.msra.mxu0 0.0
  %5873 = vmatprep.subr.mxu0 0.0
  %5874 = vmatpush1.msra.mxu0 0.0
  %5875 = vmatprep.subr.mxu0 0.0
  %5876 = vmatpush1.msra.mxu0 0.0
  %5877 = vmatprep.subr.mxu0 0.0
  %5878 = vmatpush1.msra.mxu0 0.0
  %5879 = vmatprep.subr.mxu0 0.0
  %5880 = vmatpush1.msra.mxu0 0.0
  %5881 = vmatprep.subr.mxu0 0.0
  %5882 = vmatpush1.msra.mxu0 0.0
  %5883 = vmatprep.subr.mxu0 0.0
  %5884 = vmatpush1.msra.mxu0 0.0
  %5885 = vmatprep.subr.mxu0 0.0
  %5886 = vmatpush1.msra.mxu0 0.0
  %5887 = vmatprep.subr.mxu0 0.0
  %5888 = vmatpush1.msra.mxu0 0.0
  %5889 = vmatprep.subr.mxu0 0.0
  %5890 = vmatpush1.msra.mxu0 0.0
  %5891 = vmatprep.subr.mxu0 0.0
  %5892 = vmatpush1.msra.mxu0 0.0
  %5893 = vmatprep.subr.mxu0 0.0
  %5894 = vmatpush1.msra.mxu0 0.0
  %5895 = vmatprep.subr.mxu0 0.0
  %5896 = vmatpush1.msra.mxu0 0.0
  %5897 = vmatprep.subr.mxu0 0.0
  %5898 = vmatpush1.msra.mxu0 0.0
  %5899 = vmatprep.subr.mxu0 0.0
  %5900 = vmatpush1.msra.mxu0 0.0
  %5901 = vmatprep.subr.mxu0 0.0
  %5902 = vmatpush1.msra.mxu0 0.0
  %5903 = vmatprep.mubr.f32.mxu0 0.0
  %5904 = vmatmul.mubr.f32.gmra.mrb[0].mxu0 %v4838
  %v5905 = vpop.f32.mrb[0].mxu0
  %v5906 = vadd.f32 0.0, %v5905
  %v5907 = vpop.f32.mrb[0].mxu0
  %v5908 = vadd.f32 0.0, %v5907
  %5909 = vdwg.mxu0
  %5910 = vmatprep.subr.mxu0 %v4898
  %5911 = vmatpush1.msra.mxu0 %v4896
  %5912 = vmatprep.subr.mxu0 0.0
  %5913 = vmatpush1.msra.mxu0 0.0
  %5914 = vmatprep.subr.mxu0 0.0
  %5915 = vmatpush1.msra.mxu0 0.0
  %5916 = vmatprep.subr.mxu0 0.0
  %5917 = vmatpush1.msra.mxu0 0.0
  %5918 = vmatprep.subr.mxu0 0.0
  %5919 = vmatpush1.msra.mxu0 0.0
  %5920 = vmatprep.subr.mxu0 0.0
  %5921 = vmatpush1.msra.mxu0 0.0
  %5922 = vmatprep.subr.mxu0 0.0
  %5923 = vmatpush1.msra.mxu0 0.0
  %5924 = vmatprep.subr.mxu0 0.0
  %5925 = vmatpush1.msra.mxu0 0.0
  %5926 = vmatprep.subr.mxu0 0.0
  %5927 = vmatpush1.msra.mxu0 0.0
  %5928 = vmatprep.subr.mxu0 0.0
  %5929 = vmatpush1.msra.mxu0 0.0
  %5930 = vmatprep.subr.mxu0 0.0
  %5931 = vmatpush1.msra.mxu0 0.0
  %5932 = vmatprep.subr.mxu0 0.0
  %5933 = vmatpush1.msra.mxu0 0.0
  %5934 = vmatprep.subr.mxu0 0.0
  %5935 = vmatpush1.msra.mxu0 0.0
  %5936 = vmatprep.subr.mxu0 0.0
  %5937 = vmatpush1.msra.mxu0 0.0
  %5938 = vmatprep.subr.mxu0 0.0
  %5939 = vmatpush1.msra.mxu0 0.0
  %5940 = vmatprep.subr.mxu0 0.0
  %5941 = vmatpush1.msra.mxu0 0.0
  %5942 = vmatprep.subr.mxu0 0.0
  %5943 = vmatpush1.msra.mxu0 0.0
  %5944 = vmatprep.subr.mxu0 0.0
  %5945 = vmatpush1.msra.mxu0 0.0
  %5946 = vmatprep.subr.mxu0 0.0
  %5947 = vmatpush1.msra.mxu0 0.0
  %5948 = vmatprep.subr.mxu0 0.0
  %5949 = vmatpush1.msra.mxu0 0.0
  %5950 = vmatprep.subr.mxu0 0.0
  %5951 = vmatpush1.msra.mxu0 0.0
  %5952 = vmatprep.subr.mxu0 0.0
  %5953 = vmatpush1.msra.mxu0 0.0
  %5954 = vmatprep.subr.mxu0 0.0
  %5955 = vmatpush1.msra.mxu0 0.0
  %5956 = vmatprep.subr.mxu0 0.0
  %5957 = vmatpush1.msra.mxu0 0.0
  %5958 = vmatprep.subr.mxu0 0.0
  %5959 = vmatpush1.msra.mxu0 0.0
  %5960 = vmatprep.subr.mxu0 0.0
  %5961 = vmatpush1.msra.mxu0 0.0
  %5962 = vmatprep.subr.mxu0 0.0
  %5963 = vmatpush1.msra.mxu0 0.0
  %5964 = vmatprep.subr.mxu0 0.0
  %5965 = vmatpush1.msra.mxu0 0.0
  %5966 = vmatprep.subr.mxu0 0.0
  %5967 = vmatpush1.msra.mxu0 0.0
  %5968 = vmatprep.subr.mxu0 0.0
  %5969 = vmatpush1.msra.mxu0 0.0
  %5970 = vmatprep.subr.mxu0 0.0
  %5971 = vmatpush1.msra.mxu0 0.0
  %5972 = vmatprep.subr.mxu0 0.0
  %5973 = vmatpush1.msra.mxu0 0.0
  %5974 = vmatprep.mubr.f32.mxu0 0.0
  %5975 = vmatmul.mubr.f32.gmra.mrb[0].mxu0 %v4838
  %v5976 = vpop.f32.mrb[0].mxu0
  %v5977 = vadd.f32 0.0, %v5976
  %v5978 = vpop.f32.mrb[0].mxu0
  %v5979 = vadd.f32 0.0, %v5978
  %5980 = vdwg.mxu0
  %5981 = vmatprep.subr.mxu0 %v4902
  %5982 = vmatpush1.msra.mxu0 %v4900
  %5983 = vmatprep.subr.mxu0 0.0
  %5984 = vmatpush1.msra.mxu0 0.0
  %5985 = vmatprep.subr.mxu0 0.0
  %5986 = vmatpush1.msra.mxu0 0.0
  %5987 = vmatprep.subr.mxu0 0.0
  %5988 = vmatpush1.msra.mxu0 0.0
  %5989 = vmatprep.subr.mxu0 0.0
  %5990 = vmatpush1.msra.mxu0 0.0
  %5991 = vmatprep.subr.mxu0 0.0
  %5992 = vmatpush1.msra.mxu0 0.0
  %5993 = vmatprep.subr.mxu0 0.0
  %5994 = vmatpush1.msra.mxu0 0.0
  %5995 = vmatprep.subr.mxu0 0.0
  %5996 = vmatpush1.msra.mxu0 0.0
  %5997 = vmatprep.subr.mxu0 0.0
  %5998 = vmatpush1.msra.mxu0 0.0
  %5999 = vmatprep.subr.mxu0 0.0
  %6000 = vmatpush1.msra.mxu0 0.0
  %6001 = vmatprep.subr.mxu0 0.0
  %6002 = vmatpush1.msra.mxu0 0.0
  %6003 = vmatprep.subr.mxu0 0.0
  %6004 = vmatpush1.msra.mxu0 0.0
  %6005 = vmatprep.subr.mxu0 0.0
  %6006 = vmatpush1.msra.mxu0 0.0
  %6007 = vmatprep.subr.mxu0 0.0
  %6008 = vmatpush1.msra.mxu0 0.0
  %6009 = vmatprep.subr.mxu0 0.0
  %6010 = vmatpush1.msra.mxu0 0.0
  %6011 = vmatprep.subr.mxu0 0.0
  %6012 = vmatpush1.msra.mxu0 0.0
  %6013 = vmatprep.subr.mxu0 0.0
  %6014 = vmatpush1.msra.mxu0 0.0
  %6015 = vmatprep.subr.mxu0 0.0
  %6016 = vmatpush1.msra.mxu0 0.0
  %6017 = vmatprep.subr.mxu0 0.0
  %6018 = vmatpush1.msra.mxu0 0.0
  %6019 = vmatprep.subr.mxu0 0.0
  %6020 = vmatpush1.msra.mxu0 0.0
  %6021 = vmatprep.subr.mxu0 0.0
  %6022 = vmatpush1.msra.mxu0 0.0
  %6023 = vmatprep.subr.mxu0 0.0
  %6024 = vmatpush1.msra.mxu0 0.0
  %6025 = vmatprep.subr.mxu0 0.0
  %6026 = vmatpush1.msra.mxu0 0.0
  %6027 = vmatprep.subr.mxu0 0.0
  %6028 = vmatpush1.msra.mxu0 0.0
  %6029 = vmatprep.subr.mxu0 0.0
  %6030 = vmatpush1.msra.mxu0 0.0
  %6031 = vmatprep.subr.mxu0 0.0
  %6032 = vmatpush1.msra.mxu0 0.0
  %6033 = vmatprep.subr.mxu0 0.0
  %6034 = vmatpush1.msra.mxu0 0.0
  %6035 = vmatprep.subr.mxu0 0.0
  %6036 = vmatpush1.msra.mxu0 0.0
  %6037 = vmatprep.subr.mxu0 0.0
  %6038 = vmatpush1.msra.mxu0 0.0
  %6039 = vmatprep.subr.mxu0 0.0
  %6040 = vmatpush1.msra.mxu0 0.0
  %6041 = vmatprep.subr.mxu0 0.0
  %6042 = vmatpush1.msra.mxu0 0.0
  %6043 = vmatprep.subr.mxu0 0.0
  %6044 = vmatpush1.msra.mxu0 0.0
  %6045 = vmatprep.mubr.f32.mxu0 0.0
  %6046 = vmatmul.mubr.f32.gmra.mrb[0].mxu0 %v4838
  %v6047 = vpop.f32.mrb[0].mxu0
  %v6048 = vadd.f32 0.0, %v6047
  %v6049 = vpop.f32.mrb[0].mxu0
  %v6050 = vadd.f32 0.0, %v6049
  %6051 = vdwg.mxu0
  %6052 = vmatprep.subr.mxu0 %v4906
  %6053 = vmatpush1.msra.mxu0 %v4904
  %6054 = vmatprep.subr.mxu0 0.0
  %6055 = vmatpush1.msra.mxu0 0.0
  %6056 = vmatprep.subr.mxu0 0.0
  %6057 = vmatpush1.msra.mxu0 0.0
  %6058 = vmatprep.subr.mxu0 0.0
  %6059 = vmatpush1.msra.mxu0 0.0
  %6060 = vmatprep.subr.mxu0 0.0
  %6061 = vmatpush1.msra.mxu0 0.0
  %6062 = vmatprep.subr.mxu0 0.0
  %6063 = vmatpush1.msra.mxu0 0.0
  %6064 = vmatprep.subr.mxu0 0.0
  %6065 = vmatpush1.msra.mxu0 0.0
  %6066 = vmatprep.subr.mxu0 0.0
  %6067 = vmatpush1.msra.mxu0 0.0
  %6068 = vmatprep.subr.mxu0 0.0
  %6069 = vmatpush1.msra.mxu0 0.0
  %6070 = vmatprep.subr.mxu0 0.0
  %6071 = vmatpush1.msra.mxu0 0.0
  %6072 = vmatprep.subr.mxu0 0.0
  %6073 = vmatpush1.msra.mxu0 0.0
  %6074 = vmatprep.subr.mxu0 0.0
  %6075 = vmatpush1.msra.mxu0 0.0
  %6076 = vmatprep.subr.mxu0 0.0
  %6077 = vmatpush1.msra.mxu0 0.0
  %6078 = vmatprep.subr.mxu0 0.0
  %6079 = vmatpush1.msra.mxu0 0.0
  %6080 = vmatprep.subr.mxu0 0.0
  %6081 = vmatpush1.msra.mxu0 0.0
  %6082 = vmatprep.subr.mxu0 0.0
  %6083 = vmatpush1.msra.mxu0 0.0
  %6084 = vmatprep.subr.mxu0 0.0
  %6085 = vmatpush1.msra.mxu0 0.0
  %6086 = vmatprep.subr.mxu0 0.0
  %6087 = vmatpush1.msra.mxu0 0.0
  %6088 = vmatprep.subr.mxu0 0.0
  %6089 = vmatpush1.msra.mxu0 0.0
  %6090 = vmatprep.subr.mxu0 0.0
  %6091 = vmatpush1.msra.mxu0 0.0
  %6092 = vmatprep.subr.mxu0 0.0
  %6093 = vmatpush1.msra.mxu0 0.0
  %6094 = vmatprep.subr.mxu0 0.0
  %6095 = vmatpush1.msra.mxu0 0.0
  %6096 = vmatprep.subr.mxu0 0.0
  %6097 = vmatpush1.msra.mxu0 0.0
  %6098 = vmatprep.subr.mxu0 0.0
  %6099 = vmatpush1.msra.mxu0 0.0
  %6100 = vmatprep.subr.mxu0 0.0
  %6101 = vmatpush1.msra.mxu0 0.0
  %6102 = vmatprep.subr.mxu0 0.0
  %6103 = vmatpush1.msra.mxu0 0.0
  %6104 = vmatprep.subr.mxu0 0.0
  %6105 = vmatpush1.msra.mxu0 0.0
  %6106 = vmatprep.subr.mxu0 0.0
  %6107 = vmatpush1.msra.mxu0 0.0
  %6108 = vmatprep.subr.mxu0 0.0
  %6109 = vmatpush1.msra.mxu0 0.0
  %6110 = vmatprep.subr.mxu0 0.0
  %6111 = vmatpush1.msra.mxu0 0.0
  %6112 = vmatprep.subr.mxu0 0.0
  %6113 = vmatpush1.msra.mxu0 0.0
  %6114 = vmatprep.subr.mxu0 0.0
  %6115 = vmatpush1.msra.mxu0 0.0
  %6116 = vmatprep.mubr.f32.mxu0 0.0
  %6117 = vmatmul.mubr.f32.gmra.mrb[0].mxu0 %v4838
  %v6118 = vpop.f32.mrb[0].mxu0
  %v6119 = vadd.f32 0.0, %v6118
  %v6120 = vpop.f32.mrb[0].mxu0
  %v6121 = vadd.f32 0.0, %v6120
  %6122 = vdwg.mxu0
  %6123 = vmatprep.subr.mxu0 %v4910
  %6124 = vmatpush1.msra.mxu0 %v4908
  %6125 = vmatprep.subr.mxu0 0.0
  %6126 = vmatpush1.msra.mxu0 0.0
  %6127 = vmatprep.subr.mxu0 0.0
  %6128 = vmatpush1.msra.mxu0 0.0
  %6129 = vmatprep.subr.mxu0 0.0
  %6130 = vmatpush1.msra.mxu0 0.0
  %6131 = vmatprep.subr.mxu0 0.0
  %6132 = vmatpush1.msra.mxu0 0.0
  %6133 = vmatprep.subr.mxu0 0.0
  %6134 = vmatpush1.msra.mxu0 0.0
  %6135 = vmatprep.subr.mxu0 0.0
  %6136 = vmatpush1.msra.mxu0 0.0
  %6137 = vmatprep.subr.mxu0 0.0
  %6138 = vmatpush1.msra.mxu0 0.0
  %6139 = vmatprep.subr.mxu0 0.0
  %6140 = vmatpush1.msra.mxu0 0.0
  %6141 = vmatprep.subr.mxu0 0.0
  %6142 = vmatpush1.msra.mxu0 0.0
  %6143 = vmatprep.subr.mxu0 0.0
  %6144 = vmatpush1.msra.mxu0 0.0
  %6145 = vmatprep.subr.mxu0 0.0
  %6146 = vmatpush1.msra.mxu0 0.0
  %6147 = vmatprep.subr.mxu0 0.0
  %6148 = vmatpush1.msra.mxu0 0.0
  %6149 = vmatprep.subr.mxu0 0.0
  %6150 = vmatpush1.msra.mxu0 0.0
  %6151 = vmatprep.subr.mxu0 0.0
  %6152 = vmatpush1.msra.mxu0 0.0
  %6153 = vmatprep.subr.mxu0 0.0
  %6154 = vmatpush1.msra.mxu0 0.0
  %6155 = vmatprep.subr.mxu0 0.0
  %6156 = vmatpush1.msra.mxu0 0.0
  %6157 = vmatprep.subr.mxu0 0.0
  %6158 = vmatpush1.msra.mxu0 0.0
  %6159 = vmatprep.subr.mxu0 0.0
  %6160 = vmatpush1.msra.mxu0 0.0
  %6161 = vmatprep.subr.mxu0 0.0
  %6162 = vmatpush1.msra.mxu0 0.0
  %6163 = vmatprep.subr.mxu0 0.0
  %6164 = vmatpush1.msra.mxu0 0.0
  %6165 = vmatprep.subr.mxu0 0.0
  %6166 = vmatpush1.msra.mxu0 0.0
  %6167 = vmatprep.subr.mxu0 0.0
  %6168 = vmatpush1.msra.mxu0 0.0
  %6169 = vmatprep.subr.mxu0 0.0
  %6170 = vmatpush1.msra.mxu0 0.0
  %6171 = vmatprep.subr.mxu0 0.0
  %6172 = vmatpush1.msra.mxu0 0.0
  %6173 = vmatprep.subr.mxu0 0.0
  %6174 = vmatpush1.msra.mxu0 0.0
  %6175 = vmatprep.subr.mxu0 0.0
  %6176 = vmatpush1.msra.mxu0 0.0
  %6177 = vmatprep.subr.mxu0 0.0
  %6178 = vmatpush1.msra.mxu0 0.0
  %6179 = vmatprep.subr.mxu0 0.0
  %6180 = vmatpush1.msra.mxu0 0.0
  %6181 = vmatprep.subr.mxu0 0.0
  %6182 = vmatpush1.msra.mxu0 0.0
  %6183 = vmatprep.subr.mxu0 0.0
  %6184 = vmatpush1.msra.mxu0 0.0
  %6185 = vmatprep.subr.mxu0 0.0
  %6186 = vmatpush1.msra.mxu0 0.0
  %6187 = vmatprep.mubr.f32.mxu0 0.0
  %6188 = vmatmul.mubr.f32.gmra.mrb[0].mxu0 %v4838
  %v6189 = vpop.f32.mrb[0].mxu0
  %v6190 = vadd.f32 0.0, %v6189
  %v6191 = vpop.f32.mrb[0].mxu0
  %v6192 = vadd.f32 0.0, %v6191
  %6193 = vdwg.mxu0
  %6194 = vmatprep.subr.mxu0 %v4914
  %6195 = vmatpush1.msra.mxu0 %v4912
  %6196 = vmatprep.subr.mxu0 0.0
  %6197 = vmatpush1.msra.mxu0 0.0
  %6198 = vmatprep.subr.mxu0 0.0
  %6199 = vmatpush1.msra.mxu0 0.0
  %6200 = vmatprep.subr.mxu0 0.0
  %6201 = vmatpush1.msra.mxu0 0.0
  %6202 = vmatprep.subr.mxu0 0.0
  %6203 = vmatpush1.msra.mxu0 0.0
  %6204 = vmatprep.subr.mxu0 0.0
  %6205 = vmatpush1.msra.mxu0 0.0
  %6206 = vmatprep.subr.mxu0 0.0
  %6207 = vmatpush1.msra.mxu0 0.0
  %6208 = vmatprep.subr.mxu0 0.0
  %6209 = vmatpush1.msra.mxu0 0.0
  %6210 = vmatprep.subr.mxu0 0.0
  %6211 = vmatpush1.msra.mxu0 0.0
  %6212 = vmatprep.subr.mxu0 0.0
  %6213 = vmatpush1.msra.mxu0 0.0
  %6214 = vmatprep.subr.mxu0 0.0
  %6215 = vmatpush1.msra.mxu0 0.0
  %6216 = vmatprep.subr.mxu0 0.0
  %6217 = vmatpush1.msra.mxu0 0.0
  %6218 = vmatprep.subr.mxu0 0.0
  %6219 = vmatpush1.msra.mxu0 0.0
  %6220 = vmatprep.subr.mxu0 0.0
  %6221 = vmatpush1.msra.mxu0 0.0
  %6222 = vmatprep.subr.mxu0 0.0
  %6223 = vmatpush1.msra.mxu0 0.0
  %6224 = vmatprep.subr.mxu0 0.0
  %6225 = vmatpush1.msra.mxu0 0.0
  %6226 = vmatprep.subr.mxu0 0.0
  %6227 = vmatpush1.msra.mxu0 0.0
  %6228 = vmatprep.subr.mxu0 0.0
  %6229 = vmatpush1.msra.mxu0 0.0
  %6230 = vmatprep.subr.mxu0 0.0
  %6231 = vmatpush1.msra.mxu0 0.0
  %6232 = vmatprep.subr.mxu0 0.0
  %6233 = vmatpush1.msra.mxu0 0.0
  %6234 = vmatprep.subr.mxu0 0.0
  %6235 = vmatpush1.msra.mxu0 0.0
  %6236 = vmatprep.subr.mxu0 0.0
  %6237 = vmatpush1.msra.mxu0 0.0
  %6238 = vmatprep.subr.mxu0 0.0
  %6239 = vmatpush1.msra.mxu0 0.0
  %6240 = vmatprep.subr.mxu0 0.0
  %6241 = vmatpush1.msra.mxu0 0.0
  %6242 = vmatprep.subr.mxu0 0.0
  %6243 = vmatpush1.msra.mxu0 0.0
  %6244 = vmatprep.subr.mxu0 0.0
  %6245 = vmatpush1.msra.mxu0 0.0
  %6246 = vmatprep.subr.mxu0 0.0
  %6247 = vmatpush1.msra.mxu0 0.0
  %6248 = vmatprep.subr.mxu0 0.0
  %6249 = vmatpush1.msra.mxu0 0.0
  %6250 = vmatprep.subr.mxu0 0.0
  %6251 = vmatpush1.msra.mxu0 0.0
  %6252 = vmatprep.subr.mxu0 0.0
  %6253 = vmatpush1.msra.mxu0 0.0
  %6254 = vmatprep.subr.mxu0 0.0
  %6255 = vmatpush1.msra.mxu0 0.0
  %6256 = vmatprep.subr.mxu0 0.0
  %6257 = vmatpush1.msra.mxu0 0.0
  %6258 = vmatprep.mubr.f32.mxu0 0.0
  %6259 = vmatmul.mubr.f32.gmra.mrb[0].mxu0 %v4838
  %v6260 = vpop.f32.mrb[0].mxu0
  %v6261 = vadd.f32 0.0, %v6260
  %v6262 = vpop.f32.mrb[0].mxu0
  %v6263 = vadd.f32 0.0, %v6262
  %6264 = vdwg.mxu0
  %v6265 = vadd.f32 %v4680, %v4983
  %v6266 = vadd.f32 %v4681, %v4985
  %v6267 = vadd.f32 %v4682, %v5054
  %v6268 = vadd.f32 %v4683, %v5056
  %v6269 = vadd.f32 %v4684, %v5125
  %v6270 = vadd.f32 %v4685, %v5127
  %v6271 = vadd.f32 %v4686, %v5196
  %v6272 = vadd.f32 %v4687, %v5198
  %v6273 = vadd.f32 %v4688, %v5267
  %v6274 = vadd.f32 %v4689, %v5269
  %v6275 = vadd.f32 %v4690, %v5338
  %v6276 = vadd.f32 %v4691, %v5340
  %v6277 = vadd.f32 %v4692, %v5409
  %v6278 = vadd.f32 %v4693, %v5411
  %v6279 = vadd.f32 %v4694, %v5480
  %v6280 = vadd.f32 %v4695, %v5482
  %v6281 = vadd.f32 %v4696, %v5551
  %v6282 = vadd.f32 %v4697, %v5553
  %v6283 = vadd.f32 %v4698, %v5622
  %v6284 = vadd.f32 %v4699, %v5624
  %v6285 = vadd.f32 %v4700, %v5693
  %v6286 = vadd.f32 %v4701, %v5695
  %v6287 = vadd.f32 %v4702, %v5764
  %v6288 = vadd.f32 %v4703, %v5766
  %v6289 = vadd.f32 %v4704, %v5835
  %v6290 = vadd.f32 %v4705, %v5837
  %v6291 = vadd.f32 %v4706, %v5906
  %v6292 = vadd.f32 %v4707, %v5908
  %v6293 = vadd.f32 %v4708, %v5977
  %v6294 = vadd.f32 %v4709, %v5979
  %v6295 = vadd.f32 %v4710, %v6048
  %v6296 = vadd.f32 %v4711, %v6050
  %v6297 = vadd.f32 %v4712, %v6119
  %v6298 = vadd.f32 %v4713, %v6121
  %v6299 = vadd.f32 %v4714, %v6190
  %v6300 = vadd.f32 %v4715, %v6192
  %v6301 = vadd.f32 %v4716, %v6261
  %v6302 = vadd.f32 %v4717, %v6263
  %s6303 = scalar_lea.vmem %s1, 32
  %v6304 = vld [vmem:[%s6303] sm:$0xff]
  %6305 = vrot.lane.b32.xlu0 %v14, 57
  %v6306 = vpop.permute.xlu0 %6305
  %6307 = vrot.lane.b32.xlu0 %v60, 57
  %v6308 = vpop.permute.xlu0 %6307
  %6309 = vrot.lane.b32.xlu0 %v15, 57
  %v6310 = vpop.permute.xlu0 %6309
  %6311 = vrot.lane.b32.xlu0 %v61, 57
  %v6312 = vpop.permute.xlu0 %6311
  %6313 = vrot.lane.b32.xlu0 %v16, 57
  %v6314 = vpop.permute.xlu0 %6313
  %6315 = vrot.lane.b32.xlu0 %v62, 57
  %v6316 = vpop.permute.xlu0 %6315
  %6317 = vrot.lane.b32.xlu0 %v17, 57
  %v6318 = vpop.permute.xlu0 %6317
  %6319 = vrot.lane.b32.xlu0 %v63, 57
  %v6320 = vpop.permute.xlu0 %6319
  %6321 = vrot.lane.b32.xlu0 %v18, 57
  %v6322 = vpop.permute.xlu0 %6321
  %6323 = vrot.lane.b32.xlu0 %v64, 57
  %v6324 = vpop.permute.xlu0 %6323
  %6325 = vrot.lane.b32.xlu0 %v19, 57
  %v6326 = vpop.permute.xlu0 %6325
  %6327 = vrot.lane.b32.xlu0 %v65, 57
  %v6328 = vpop.permute.xlu0 %6327
  %6329 = vrot.lane.b32.xlu0 %v20, 57
  %v6330 = vpop.permute.xlu0 %6329
  %6331 = vrot.lane.b32.xlu0 %v66, 57
  %v6332 = vpop.permute.xlu0 %6331
  %6333 = vrot.lane.b32.xlu0 %v21, 57
  %v6334 = vpop.permute.xlu0 %6333
  %6335 = vrot.lane.b32.xlu0 %v67, 57
  %v6336 = vpop.permute.xlu0 %6335
  %6337 = vrot.lane.b32.xlu0 %v22, 57
  %v6338 = vpop.permute.xlu0 %6337
  %6339 = vrot.lane.b32.xlu0 %v68, 57
  %v6340 = vpop.permute.xlu0 %6339
  %6341 = vrot.lane.b32.xlu0 %v23, 57
  %v6342 = vpop.permute.xlu0 %6341
  %6343 = vrot.lane.b32.xlu0 %v69, 57
  %v6344 = vpop.permute.xlu0 %6343
  %6345 = vrot.lane.b32.xlu0 %v24, 57
  %v6346 = vpop.permute.xlu0 %6345
  %6347 = vrot.lane.b32.xlu0 %v70, 57
  %v6348 = vpop.permute.xlu0 %6347
  %6349 = vrot.lane.b32.xlu0 %v25, 57
  %v6350 = vpop.permute.xlu0 %6349
  %6351 = vrot.lane.b32.xlu0 %v71, 57
  %v6352 = vpop.permute.xlu0 %6351
  %6353 = vrot.lane.b32.xlu0 %v26, 57
  %v6354 = vpop.permute.xlu0 %6353
  %6355 = vrot.lane.b32.xlu0 %v72, 57
  %v6356 = vpop.permute.xlu0 %6355
  %6357 = vrot.lane.b32.xlu0 %v27, 57
  %v6358 = vpop.permute.xlu0 %6357
  %6359 = vrot.lane.b32.xlu0 %v73, 57
  %v6360 = vpop.permute.xlu0 %6359
  %6361 = vrot.lane.b32.xlu0 %v28, 57
  %v6362 = vpop.permute.xlu0 %6361
  %6363 = vrot.lane.b32.xlu0 %v74, 57
  %v6364 = vpop.permute.xlu0 %6363
  %6365 = vrot.lane.b32.xlu0 %v29, 57
  %v6366 = vpop.permute.xlu0 %6365
  %6367 = vrot.lane.b32.xlu0 %v75, 57
  %v6368 = vpop.permute.xlu0 %6367
  %6369 = vrot.lane.b32.xlu0 %v30, 57
  %v6370 = vpop.permute.xlu0 %6369
  %6371 = vrot.lane.b32.xlu0 %v76, 57
  %v6372 = vpop.permute.xlu0 %6371
  %6373 = vrot.lane.b32.xlu0 %v31, 57
  %v6374 = vpop.permute.xlu0 %6373
  %6375 = vrot.lane.b32.xlu0 %v77, 57
  %v6376 = vpop.permute.xlu0 %6375
  %6377 = vrot.lane.b32.xlu0 %v32, 57
  %v6378 = vpop.permute.xlu0 %6377
  %6379 = vrot.lane.b32.xlu0 %v78, 57
  %v6380 = vpop.permute.xlu0 %6379
  %6381 = vrot.lane.b32.xlu0 %v33, 57
  %v6382 = vpop.permute.xlu0 %6381
  %vm6383 = vcmask 465920
  %v6384 = vsel %vm6383, %v6306, %v6308
  %v6385 = vsel %vm6383, %v6308, %v6310
  %v6386 = vsel %vm6383, %v6310, %v6312
  %v6387 = vsel %vm6383, %v6312, %v6314
  %v6388 = vsel %vm6383, %v6314, %v6316
  %v6389 = vsel %vm6383, %v6316, %v6318
  %v6390 = vsel %vm6383, %v6318, %v6320
  %v6391 = vsel %vm6383, %v6320, %v6322
  %v6392 = vsel %vm6383, %v6322, %v6324
  %v6393 = vsel %vm6383, %v6324, %v6326
  %v6394 = vsel %vm6383, %v6326, %v6328
  %v6395 = vsel %vm6383, %v6328, %v6330
  %v6396 = vsel %vm6383, %v6330, %v6332
  %v6397 = vsel %vm6383, %v6332, %v6334
  %v6398 = vsel %vm6383, %v6334, %v6336
  %v6399 = vsel %vm6383, %v6336, %v6338
  %v6400 = vsel %vm6383, %v6338, %v6340
  %v6401 = vsel %vm6383, %v6340, %v6342
  %v6402 = vsel %vm6383, %v6342, %v6344
  %v6403 = vsel %vm6383, %v6344, %v6346
  %v6404 = vsel %vm6383, %v6346, %v6348
  %v6405 = vsel %vm6383, %v6348, %v6350
  %v6406 = vsel %vm6383, %v6350, %v6352
  %v6407 = vsel %vm6383, %v6352, %v6354
  %v6408 = vsel %vm6383, %v6354, %v6356
  %v6409 = vsel %vm6383, %v6356, %v6358
  %v6410 = vsel %vm6383, %v6358, %v6360
  %v6411 = vsel %vm6383, %v6360, %v6362
  %v6412 = vsel %vm6383, %v6362, %v6364
  %v6413 = vsel %vm6383, %v6364, %v6366
  %v6414 = vsel %vm6383, %v6366, %v6368
  %v6415 = vsel %vm6383, %v6368, %v6370
  %v6416 = vsel %vm6383, %v6370, %v6372
  %v6417 = vsel %vm6383, %v6372, %v6374
  %v6418 = vsel %vm6383, %v6374, %v6376
  %v6419 = vsel %vm6383, %v6376, %v6378
  %v6420 = vsel %vm6383, %v6378, %v6380
  %v6421 = vsel %vm6383, %v6380, %v6382
  %v6423 = vsel %vm79, %v6304, 0
  %v6425 = vsel %vm83, %v6384, 0
  %v6427 = vsel %vm83, %v6385, 0
  %v6429 = vsel %vm83, %v6386, 0
  %v6431 = vsel %vm83, %v6387, 0
  %v6433 = vsel %vm83, %v6388, 0
  %v6435 = vsel %vm83, %v6389, 0
  %v6437 = vsel %vm83, %v6390, 0
  %v6439 = vsel %vm83, %v6391, 0
  %v6441 = vsel %vm83, %v6392, 0
  %v6443 = vsel %vm83, %v6393, 0
  %v6445 = vsel %vm83, %v6394, 0
  %v6447 = vsel %vm83, %v6395, 0
  %v6449 = vsel %vm83, %v6396, 0
  %v6451 = vsel %vm83, %v6397, 0
  %v6453 = vsel %vm83, %v6398, 0
  %v6455 = vsel %vm83, %v6399, 0
  %v6457 = vsel %vm83, %v6400, 0
  %v6459 = vsel %vm83, %v6401, 0
  %v6461 = vsel %vm83, %v6402, 0
  %v6463 = vsel %vm83, %v6403, 0
  %v6465 = vsel %vm83, %v6404, 0
  %v6467 = vsel %vm83, %v6405, 0
  %v6469 = vsel %vm83, %v6406, 0
  %v6471 = vsel %vm83, %v6407, 0
  %v6473 = vsel %vm83, %v6408, 0
  %v6475 = vsel %vm83, %v6409, 0
  %v6477 = vsel %vm83, %v6410, 0
  %v6479 = vsel %vm83, %v6411, 0
  %v6481 = vsel %vm83, %v6412, 0
  %v6483 = vsel %vm83, %v6413, 0
  %v6485 = vsel %vm83, %v6414, 0
  %v6487 = vsel %vm83, %v6415, 0
  %v6489 = vsel %vm83, %v6416, 0
  %v6491 = vsel %vm83, %v6417, 0
  %v6493 = vsel %vm83, %v6418, 0
  %v6495 = vsel %vm83, %v6419, 0
  %v6497 = vsel %vm83, %v6420, 0
  %v6499 = vsel %vm83, %v6421, 0
  %6501 = vmatprep.subr.mxu0 %v6427
  %6502 = vmatpush1.msra.mxu0 %v6425
  %6503 = vmatprep.subr.mxu0 0.0
  %6504 = vmatpush1.msra.mxu0 0.0
  %6505 = vmatprep.subr.mxu0 0.0
  %6506 = vmatpush1.msra.mxu0 0.0
  %6507 = vmatprep.subr.mxu0 0.0
  %6508 = vmatpush1.msra.mxu0 0.0
  %6509 = vmatprep.subr.mxu0 0.0
  %6510 = vmatpush1.msra.mxu0 0.0
  %6511 = vmatprep.subr.mxu0 0.0
  %6512 = vmatpush1.msra.mxu0 0.0
  %6513 = vmatprep.subr.mxu0 0.0
  %6514 = vmatpush1.msra.mxu0 0.0
  %6515 = vmatprep.subr.mxu0 0.0
  %6516 = vmatpush1.msra.mxu0 0.0
  %6517 = vmatprep.subr.mxu0 0.0
  %6518 = vmatpush1.msra.mxu0 0.0
  %6519 = vmatprep.subr.mxu0 0.0
  %6520 = vmatpush1.msra.mxu0 0.0
  %6521 = vmatprep.subr.mxu0 0.0
  %6522 = vmatpush1.msra.mxu0 0.0
  %6523 = vmatprep.subr.mxu0 0.0
  %6524 = vmatpush1.msra.mxu0 0.0
  %6525 = vmatprep.subr.mxu0 0.0
  %6526 = vmatpush1.msra.mxu0 0.0
  %6527 = vmatprep.subr.mxu0 0.0
  %6528 = vmatpush1.msra.mxu0 0.0
  %6529 = vmatprep.subr.mxu0 0.0
  %6530 = vmatpush1.msra.mxu0 0.0
  %6531 = vmatprep.subr.mxu0 0.0
  %6532 = vmatpush1.msra.mxu0 0.0
  %6533 = vmatprep.subr.mxu0 0.0
  %6534 = vmatpush1.msra.mxu0 0.0
  %6535 = vmatprep.subr.mxu0 0.0
  %6536 = vmatpush1.msra.mxu0 0.0
  %6537 = vmatprep.subr.mxu0 0.0
  %6538 = vmatpush1.msra.mxu0 0.0
  %6539 = vmatprep.subr.mxu0 0.0
  %6540 = vmatpush1.msra.mxu0 0.0
  %6541 = vmatprep.subr.mxu0 0.0
  %6542 = vmatpush1.msra.mxu0 0.0
  %6543 = vmatprep.subr.mxu0 0.0
  %6544 = vmatpush1.msra.mxu0 0.0
  %6545 = vmatprep.subr.mxu0 0.0
  %6546 = vmatpush1.msra.mxu0 0.0
  %6547 = vmatprep.subr.mxu0 0.0
  %6548 = vmatpush1.msra.mxu0 0.0
  %6549 = vmatprep.subr.mxu0 0.0
  %6550 = vmatpush1.msra.mxu0 0.0
  %6551 = vmatprep.subr.mxu0 0.0
  %6552 = vmatpush1.msra.mxu0 0.0
  %6553 = vmatprep.subr.mxu0 0.0
  %6554 = vmatpush1.msra.mxu0 0.0
  %6555 = vmatprep.subr.mxu0 0.0
  %6556 = vmatpush1.msra.mxu0 0.0
  %6557 = vmatprep.subr.mxu0 0.0
  %6558 = vmatpush1.msra.mxu0 0.0
  %6559 = vmatprep.subr.mxu0 0.0
  %6560 = vmatpush1.msra.mxu0 0.0
  %6561 = vmatprep.subr.mxu0 0.0
  %6562 = vmatpush1.msra.mxu0 0.0
  %6563 = vmatprep.subr.mxu0 0.0
  %6564 = vmatpush1.msra.mxu0 0.0
  %6565 = vmatprep.mubr.f32.mxu0 0.0
  %6566 = vmatmul.mubr.f32.gmra.mrb[0].mxu0 %v6423
  %v6567 = vpop.f32.mrb[0].mxu0
  %v6568 = vadd.f32 0.0, %v6567
  %v6569 = vpop.f32.mrb[0].mxu0
  %v6570 = vadd.f32 0.0, %v6569
  %6571 = vdwg.mxu0
  %6572 = vmatprep.subr.mxu0 %v6431
  %6573 = vmatpush1.msra.mxu0 %v6429
  %6574 = vmatprep.subr.mxu0 0.0
  %6575 = vmatpush1.msra.mxu0 0.0
  %6576 = vmatprep.subr.mxu0 0.0
  %6577 = vmatpush1.msra.mxu0 0.0
  %6578 = vmatprep.subr.mxu0 0.0
  %6579 = vmatpush1.msra.mxu0 0.0
  %6580 = vmatprep.subr.mxu0 0.0
  %6581 = vmatpush1.msra.mxu0 0.0
  %6582 = vmatprep.subr.mxu0 0.0
  %6583 = vmatpush1.msra.mxu0 0.0
  %6584 = vmatprep.subr.mxu0 0.0
  %6585 = vmatpush1.msra.mxu0 0.0
  %6586 = vmatprep.subr.mxu0 0.0
  %6587 = vmatpush1.msra.mxu0 0.0
  %6588 = vmatprep.subr.mxu0 0.0
  %6589 = vmatpush1.msra.mxu0 0.0
  %6590 = vmatprep.subr.mxu0 0.0
  %6591 = vmatpush1.msra.mxu0 0.0
  %6592 = vmatprep.subr.mxu0 0.0
  %6593 = vmatpush1.msra.mxu0 0.0
  %6594 = vmatprep.subr.mxu0 0.0
  %6595 = vmatpush1.msra.mxu0 0.0
  %6596 = vmatprep.subr.mxu0 0.0
  %6597 = vmatpush1.msra.mxu0 0.0
  %6598 = vmatprep.subr.mxu0 0.0
  %6599 = vmatpush1.msra.mxu0 0.0
  %6600 = vmatprep.subr.mxu0 0.0
  %6601 = vmatpush1.msra.mxu0 0.0
  %6602 = vmatprep.subr.mxu0 0.0
  %6603 = vmatpush1.msra.mxu0 0.0
  %6604 = vmatprep.subr.mxu0 0.0
  %6605 = vmatpush1.msra.mxu0 0.0
  %6606 = vmatprep.subr.mxu0 0.0
  %6607 = vmatpush1.msra.mxu0 0.0
  %6608 = vmatprep.subr.mxu0 0.0
  %6609 = vmatpush1.msra.mxu0 0.0
  %6610 = vmatprep.subr.mxu0 0.0
  %6611 = vmatpush1.msra.mxu0 0.0
  %6612 = vmatprep.subr.mxu0 0.0
  %6613 = vmatpush1.msra.mxu0 0.0
  %6614 = vmatprep.subr.mxu0 0.0
  %6615 = vmatpush1.msra.mxu0 0.0
  %6616 = vmatprep.subr.mxu0 0.0
  %6617 = vmatpush1.msra.mxu0 0.0
  %6618 = vmatprep.subr.mxu0 0.0
  %6619 = vmatpush1.msra.mxu0 0.0
  %6620 = vmatprep.subr.mxu0 0.0
  %6621 = vmatpush1.msra.mxu0 0.0
  %6622 = vmatprep.subr.mxu0 0.0
  %6623 = vmatpush1.msra.mxu0 0.0
  %6624 = vmatprep.subr.mxu0 0.0
  %6625 = vmatpush1.msra.mxu0 0.0
  %6626 = vmatprep.subr.mxu0 0.0
  %6627 = vmatpush1.msra.mxu0 0.0
  %6628 = vmatprep.subr.mxu0 0.0
  %6629 = vmatpush1.msra.mxu0 0.0
  %6630 = vmatprep.subr.mxu0 0.0
  %6631 = vmatpush1.msra.mxu0 0.0
  %6632 = vmatprep.subr.mxu0 0.0
  %6633 = vmatpush1.msra.mxu0 0.0
  %6634 = vmatprep.subr.mxu0 0.0
  %6635 = vmatpush1.msra.mxu0 0.0
  %6636 = vmatprep.mubr.f32.mxu0 0.0
  %6637 = vmatmul.mubr.f32.gmra.mrb[0].mxu0 %v6423
  %v6638 = vpop.f32.mrb[0].mxu0
  %v6639 = vadd.f32 0.0, %v6638
  %v6640 = vpop.f32.mrb[0].mxu0
  %v6641 = vadd.f32 0.0, %v6640
  %6642 = vdwg.mxu0
  %6643 = vmatprep.subr.mxu0 %v6435
  %6644 = vmatpush1.msra.mxu0 %v6433
  %6645 = vmatprep.subr.mxu0 0.0
  %6646 = vmatpush1.msra.mxu0 0.0
  %6647 = vmatprep.subr.mxu0 0.0
  %6648 = vmatpush1.msra.mxu0 0.0
  %6649 = vmatprep.subr.mxu0 0.0
  %6650 = vmatpush1.msra.mxu0 0.0
  %6651 = vmatprep.subr.mxu0 0.0
  %6652 = vmatpush1.msra.mxu0 0.0
  %6653 = vmatprep.subr.mxu0 0.0
  %6654 = vmatpush1.msra.mxu0 0.0
  %6655 = vmatprep.subr.mxu0 0.0
  %6656 = vmatpush1.msra.mxu0 0.0
  %6657 = vmatprep.subr.mxu0 0.0
  %6658 = vmatpush1.msra.mxu0 0.0
  %6659 = vmatprep.subr.mxu0 0.0
  %6660 = vmatpush1.msra.mxu0 0.0
  %6661 = vmatprep.subr.mxu0 0.0
  %6662 = vmatpush1.msra.mxu0 0.0
  %6663 = vmatprep.subr.mxu0 0.0
  %6664 = vmatpush1.msra.mxu0 0.0
  %6665 = vmatprep.subr.mxu0 0.0
  %6666 = vmatpush1.msra.mxu0 0.0
  %6667 = vmatprep.subr.mxu0 0.0
  %6668 = vmatpush1.msra.mxu0 0.0
  %6669 = vmatprep.subr.mxu0 0.0
  %6670 = vmatpush1.msra.mxu0 0.0
  %6671 = vmatprep.subr.mxu0 0.0
  %6672 = vmatpush1.msra.mxu0 0.0
  %6673 = vmatprep.subr.mxu0 0.0
  %6674 = vmatpush1.msra.mxu0 0.0
  %6675 = vmatprep.subr.mxu0 0.0
  %6676 = vmatpush1.msra.mxu0 0.0
  %6677 = vmatprep.subr.mxu0 0.0
  %6678 = vmatpush1.msra.mxu0 0.0
  %6679 = vmatprep.subr.mxu0 0.0
  %6680 = vmatpush1.msra.mxu0 0.0
  %6681 = vmatprep.subr.mxu0 0.0
  %6682 = vmatpush1.msra.mxu0 0.0
  %6683 = vmatprep.subr.mxu0 0.0
  %6684 = vmatpush1.msra.mxu0 0.0
  %6685 = vmatprep.subr.mxu0 0.0
  %6686 = vmatpush1.msra.mxu0 0.0
  %6687 = vmatprep.subr.mxu0 0.0
  %6688 = vmatpush1.msra.mxu0 0.0
  %6689 = vmatprep.subr.mxu0 0.0
  %6690 = vmatpush1.msra.mxu0 0.0
  %6691 = vmatprep.subr.mxu0 0.0
  %6692 = vmatpush1.msra.mxu0 0.0
  %6693 = vmatprep.subr.mxu0 0.0
  %6694 = vmatpush1.msra.mxu0 0.0
  %6695 = vmatprep.subr.mxu0 0.0
  %6696 = vmatpush1.msra.mxu0 0.0
  %6697 = vmatprep.subr.mxu0 0.0
  %6698 = vmatpush1.msra.mxu0 0.0
  %6699 = vmatprep.subr.mxu0 0.0
  %6700 = vmatpush1.msra.mxu0 0.0
  %6701 = vmatprep.subr.mxu0 0.0
  %6702 = vmatpush1.msra.mxu0 0.0
  %6703 = vmatprep.subr.mxu0 0.0
  %6704 = vmatpush1.msra.mxu0 0.0
  %6705 = vmatprep.subr.mxu0 0.0
  %6706 = vmatpush1.msra.mxu0 0.0
  %6707 = vmatprep.mubr.f32.mxu0 0.0
  %6708 = vmatmul.mubr.f32.gmra.mrb[0].mxu0 %v6423
  %v6709 = vpop.f32.mrb[0].mxu0
  %v6710 = vadd.f32 0.0, %v6709
  %v6711 = vpop.f32.mrb[0].mxu0
  %v6712 = vadd.f32 0.0, %v6711
  %6713 = vdwg.mxu0
  %6714 = vmatprep.subr.mxu0 %v6439
  %6715 = vmatpush1.msra.mxu0 %v6437
  %6716 = vmatprep.subr.mxu0 0.0
  %6717 = vmatpush1.msra.mxu0 0.0
  %6718 = vmatprep.subr.mxu0 0.0
  %6719 = vmatpush1.msra.mxu0 0.0
  %6720 = vmatprep.subr.mxu0 0.0
  %6721 = vmatpush1.msra.mxu0 0.0
  %6722 = vmatprep.subr.mxu0 0.0
  %6723 = vmatpush1.msra.mxu0 0.0
  %6724 = vmatprep.subr.mxu0 0.0
  %6725 = vmatpush1.msra.mxu0 0.0
  %6726 = vmatprep.subr.mxu0 0.0
  %6727 = vmatpush1.msra.mxu0 0.0
  %6728 = vmatprep.subr.mxu0 0.0
  %6729 = vmatpush1.msra.mxu0 0.0
  %6730 = vmatprep.subr.mxu0 0.0
  %6731 = vmatpush1.msra.mxu0 0.0
  %6732 = vmatprep.subr.mxu0 0.0
  %6733 = vmatpush1.msra.mxu0 0.0
  %6734 = vmatprep.subr.mxu0 0.0
  %6735 = vmatpush1.msra.mxu0 0.0
  %6736 = vmatprep.subr.mxu0 0.0
  %6737 = vmatpush1.msra.mxu0 0.0
  %6738 = vmatprep.subr.mxu0 0.0
  %6739 = vmatpush1.msra.mxu0 0.0
  %6740 = vmatprep.subr.mxu0 0.0
  %6741 = vmatpush1.msra.mxu0 0.0
  %6742 = vmatprep.subr.mxu0 0.0
  %6743 = vmatpush1.msra.mxu0 0.0
  %6744 = vmatprep.subr.mxu0 0.0
  %6745 = vmatpush1.msra.mxu0 0.0
  %6746 = vmatprep.subr.mxu0 0.0
  %6747 = vmatpush1.msra.mxu0 0.0
  %6748 = vmatprep.subr.mxu0 0.0
  %6749 = vmatpush1.msra.mxu0 0.0
  %6750 = vmatprep.subr.mxu0 0.0
  %6751 = vmatpush1.msra.mxu0 0.0
  %6752 = vmatprep.subr.mxu0 0.0
  %6753 = vmatpush1.msra.mxu0 0.0
  %6754 = vmatprep.subr.mxu0 0.0
  %6755 = vmatpush1.msra.mxu0 0.0
  %6756 = vmatprep.subr.mxu0 0.0
  %6757 = vmatpush1.msra.mxu0 0.0
  %6758 = vmatprep.subr.mxu0 0.0
  %6759 = vmatpush1.msra.mxu0 0.0
  %6760 = vmatprep.subr.mxu0 0.0
  %6761 = vmatpush1.msra.mxu0 0.0
  %6762 = vmatprep.subr.mxu0 0.0
  %6763 = vmatpush1.msra.mxu0 0.0
  %6764 = vmatprep.subr.mxu0 0.0
  %6765 = vmatpush1.msra.mxu0 0.0
  %6766 = vmatprep.subr.mxu0 0.0
  %6767 = vmatpush1.msra.mxu0 0.0
  %6768 = vmatprep.subr.mxu0 0.0
  %6769 = vmatpush1.msra.mxu0 0.0
  %6770 = vmatprep.subr.mxu0 0.0
  %6771 = vmatpush1.msra.mxu0 0.0
  %6772 = vmatprep.subr.mxu0 0.0
  %6773 = vmatpush1.msra.mxu0 0.0
  %6774 = vmatprep.subr.mxu0 0.0
  %6775 = vmatpush1.msra.mxu0 0.0
  %6776 = vmatprep.subr.mxu0 0.0
  %6777 = vmatpush1.msra.mxu0 0.0
  %6778 = vmatprep.mubr.f32.mxu0 0.0
  %6779 = vmatmul.mubr.f32.gmra.mrb[0].mxu0 %v6423
  %v6780 = vpop.f32.mrb[0].mxu0
  %v6781 = vadd.f32 0.0, %v6780
  %v6782 = vpop.f32.mrb[0].mxu0
  %v6783 = vadd.f32 0.0, %v6782
  %6784 = vdwg.mxu0
  %6785 = vmatprep.subr.mxu0 %v6443
  %6786 = vmatpush1.msra.mxu0 %v6441
  %6787 = vmatprep.subr.mxu0 0.0
  %6788 = vmatpush1.msra.mxu0 0.0
  %6789 = vmatprep.subr.mxu0 0.0
  %6790 = vmatpush1.msra.mxu0 0.0
  %6791 = vmatprep.subr.mxu0 0.0
  %6792 = vmatpush1.msra.mxu0 0.0
  %6793 = vmatprep.subr.mxu0 0.0
  %6794 = vmatpush1.msra.mxu0 0.0
  %6795 = vmatprep.subr.mxu0 0.0
  %6796 = vmatpush1.msra.mxu0 0.0
  %6797 = vmatprep.subr.mxu0 0.0
  %6798 = vmatpush1.msra.mxu0 0.0
  %6799 = vmatprep.subr.mxu0 0.0
  %6800 = vmatpush1.msra.mxu0 0.0
  %6801 = vmatprep.subr.mxu0 0.0
  %6802 = vmatpush1.msra.mxu0 0.0
  %6803 = vmatprep.subr.mxu0 0.0
  %6804 = vmatpush1.msra.mxu0 0.0
  %6805 = vmatprep.subr.mxu0 0.0
  %6806 = vmatpush1.msra.mxu0 0.0
  %6807 = vmatprep.subr.mxu0 0.0
  %6808 = vmatpush1.msra.mxu0 0.0
  %6809 = vmatprep.subr.mxu0 0.0
  %6810 = vmatpush1.msra.mxu0 0.0
  %6811 = vmatprep.subr.mxu0 0.0
  %6812 = vmatpush1.msra.mxu0 0.0
  %6813 = vmatprep.subr.mxu0 0.0
  %6814 = vmatpush1.msra.mxu0 0.0
  %6815 = vmatprep.subr.mxu0 0.0
  %6816 = vmatpush1.msra.mxu0 0.0
  %6817 = vmatprep.subr.mxu0 0.0
  %6818 = vmatpush1.msra.mxu0 0.0
  %6819 = vmatprep.subr.mxu0 0.0
  %6820 = vmatpush1.msra.mxu0 0.0
  %6821 = vmatprep.subr.mxu0 0.0
  %6822 = vmatpush1.msra.mxu0 0.0
  %6823 = vmatprep.subr.mxu0 0.0
  %6824 = vmatpush1.msra.mxu0 0.0
  %6825 = vmatprep.subr.mxu0 0.0
  %6826 = vmatpush1.msra.mxu0 0.0
  %6827 = vmatprep.subr.mxu0 0.0
  %6828 = vmatpush1.msra.mxu0 0.0
  %6829 = vmatprep.subr.mxu0 0.0
  %6830 = vmatpush1.msra.mxu0 0.0
  %6831 = vmatprep.subr.mxu0 0.0
  %6832 = vmatpush1.msra.mxu0 0.0
  %6833 = vmatprep.subr.mxu0 0.0
  %6834 = vmatpush1.msra.mxu0 0.0
  %6835 = vmatprep.subr.mxu0 0.0
  %6836 = vmatpush1.msra.mxu0 0.0
  %6837 = vmatprep.subr.mxu0 0.0
  %6838 = vmatpush1.msra.mxu0 0.0
  %6839 = vmatprep.subr.mxu0 0.0
  %6840 = vmatpush1.msra.mxu0 0.0
  %6841 = vmatprep.subr.mxu0 0.0
  %6842 = vmatpush1.msra.mxu0 0.0
  %6843 = vmatprep.subr.mxu0 0.0
  %6844 = vmatpush1.msra.mxu0 0.0
  %6845 = vmatprep.subr.mxu0 0.0
  %6846 = vmatpush1.msra.mxu0 0.0
  %6847 = vmatprep.subr.mxu0 0.0
  %6848 = vmatpush1.msra.mxu0 0.0
  %6849 = vmatprep.mubr.f32.mxu0 0.0
  %6850 = vmatmul.mubr.f32.gmra.mrb[0].mxu0 %v6423
  %v6851 = vpop.f32.mrb[0].mxu0
  %v6852 = vadd.f32 0.0, %v6851
  %v6853 = vpop.f32.mrb[0].mxu0
  %v6854 = vadd.f32 0.0, %v6853
  %6855 = vdwg.mxu0
  %6856 = vmatprep.subr.mxu0 %v6447
  %6857 = vmatpush1.msra.mxu0 %v6445
  %6858 = vmatprep.subr.mxu0 0.0
  %6859 = vmatpush1.msra.mxu0 0.0
  %6860 = vmatprep.subr.mxu0 0.0
  %6861 = vmatpush1.msra.mxu0 0.0
  %6862 = vmatprep.subr.mxu0 0.0
  %6863 = vmatpush1.msra.mxu0 0.0
  %6864 = vmatprep.subr.mxu0 0.0
  %6865 = vmatpush1.msra.mxu0 0.0
  %6866 = vmatprep.subr.mxu0 0.0
  %6867 = vmatpush1.msra.mxu0 0.0
  %6868 = vmatprep.subr.mxu0 0.0
  %6869 = vmatpush1.msra.mxu0 0.0
  %6870 = vmatprep.subr.mxu0 0.0
  %6871 = vmatpush1.msra.mxu0 0.0
  %6872 = vmatprep.subr.mxu0 0.0
  %6873 = vmatpush1.msra.mxu0 0.0
  %6874 = vmatprep.subr.mxu0 0.0
  %6875 = vmatpush1.msra.mxu0 0.0
  %6876 = vmatprep.subr.mxu0 0.0
  %6877 = vmatpush1.msra.mxu0 0.0
  %6878 = vmatprep.subr.mxu0 0.0
  %6879 = vmatpush1.msra.mxu0 0.0
  %6880 = vmatprep.subr.mxu0 0.0
  %6881 = vmatpush1.msra.mxu0 0.0
  %6882 = vmatprep.subr.mxu0 0.0
  %6883 = vmatpush1.msra.mxu0 0.0
  %6884 = vmatprep.subr.mxu0 0.0
  %6885 = vmatpush1.msra.mxu0 0.0
  %6886 = vmatprep.subr.mxu0 0.0
  %6887 = vmatpush1.msra.mxu0 0.0
  %6888 = vmatprep.subr.mxu0 0.0
  %6889 = vmatpush1.msra.mxu0 0.0
  %6890 = vmatprep.subr.mxu0 0.0
  %6891 = vmatpush1.msra.mxu0 0.0
  %6892 = vmatprep.subr.mxu0 0.0
  %6893 = vmatpush1.msra.mxu0 0.0
  %6894 = vmatprep.subr.mxu0 0.0
  %6895 = vmatpush1.msra.mxu0 0.0
  %6896 = vmatprep.subr.mxu0 0.0
  %6897 = vmatpush1.msra.mxu0 0.0
  %6898 = vmatprep.subr.mxu0 0.0
  %6899 = vmatpush1.msra.mxu0 0.0
  %6900 = vmatprep.subr.mxu0 0.0
  %6901 = vmatpush1.msra.mxu0 0.0
  %6902 = vmatprep.subr.mxu0 0.0
  %6903 = vmatpush1.msra.mxu0 0.0
  %6904 = vmatprep.subr.mxu0 0.0
  %6905 = vmatpush1.msra.mxu0 0.0
  %6906 = vmatprep.subr.mxu0 0.0
  %6907 = vmatpush1.msra.mxu0 0.0
  %6908 = vmatprep.subr.mxu0 0.0
  %6909 = vmatpush1.msra.mxu0 0.0
  %6910 = vmatprep.subr.mxu0 0.0
  %6911 = vmatpush1.msra.mxu0 0.0
  %6912 = vmatprep.subr.mxu0 0.0
  %6913 = vmatpush1.msra.mxu0 0.0
  %6914 = vmatprep.subr.mxu0 0.0
  %6915 = vmatpush1.msra.mxu0 0.0
  %6916 = vmatprep.subr.mxu0 0.0
  %6917 = vmatpush1.msra.mxu0 0.0
  %6918 = vmatprep.subr.mxu0 0.0
  %6919 = vmatpush1.msra.mxu0 0.0
  %6920 = vmatprep.mubr.f32.mxu0 0.0
  %6921 = vmatmul.mubr.f32.gmra.mrb[0].mxu0 %v6423
  %v6922 = vpop.f32.mrb[0].mxu0
  %v6923 = vadd.f32 0.0, %v6922
  %v6924 = vpop.f32.mrb[0].mxu0
  %v6925 = vadd.f32 0.0, %v6924
  %6926 = vdwg.mxu0
  %6927 = vmatprep.subr.mxu0 %v6451
  %6928 = vmatpush1.msra.mxu0 %v6449
  %6929 = vmatprep.subr.mxu0 0.0
  %6930 = vmatpush1.msra.mxu0 0.0
  %6931 = vmatprep.subr.mxu0 0.0
  %6932 = vmatpush1.msra.mxu0 0.0
  %6933 = vmatprep.subr.mxu0 0.0
  %6934 = vmatpush1.msra.mxu0 0.0
  %6935 = vmatprep.subr.mxu0 0.0
  %6936 = vmatpush1.msra.mxu0 0.0
  %6937 = vmatprep.subr.mxu0 0.0
  %6938 = vmatpush1.msra.mxu0 0.0
  %6939 = vmatprep.subr.mxu0 0.0
  %6940 = vmatpush1.msra.mxu0 0.0
  %6941 = vmatprep.subr.mxu0 0.0
  %6942 = vmatpush1.msra.mxu0 0.0
  %6943 = vmatprep.subr.mxu0 0.0
  %6944 = vmatpush1.msra.mxu0 0.0
  %6945 = vmatprep.subr.mxu0 0.0
  %6946 = vmatpush1.msra.mxu0 0.0
  %6947 = vmatprep.subr.mxu0 0.0
  %6948 = vmatpush1.msra.mxu0 0.0
  %6949 = vmatprep.subr.mxu0 0.0
  %6950 = vmatpush1.msra.mxu0 0.0
  %6951 = vmatprep.subr.mxu0 0.0
  %6952 = vmatpush1.msra.mxu0 0.0
  %6953 = vmatprep.subr.mxu0 0.0
  %6954 = vmatpush1.msra.mxu0 0.0
  %6955 = vmatprep.subr.mxu0 0.0
  %6956 = vmatpush1.msra.mxu0 0.0
  %6957 = vmatprep.subr.mxu0 0.0
  %6958 = vmatpush1.msra.mxu0 0.0
  %6959 = vmatprep.subr.mxu0 0.0
  %6960 = vmatpush1.msra.mxu0 0.0
  %6961 = vmatprep.subr.mxu0 0.0
  %6962 = vmatpush1.msra.mxu0 0.0
  %6963 = vmatprep.subr.mxu0 0.0
  %6964 = vmatpush1.msra.mxu0 0.0
  %6965 = vmatprep.subr.mxu0 0.0
  %6966 = vmatpush1.msra.mxu0 0.0
  %6967 = vmatprep.subr.mxu0 0.0
  %6968 = vmatpush1.msra.mxu0 0.0
  %6969 = vmatprep.subr.mxu0 0.0
  %6970 = vmatpush1.msra.mxu0 0.0
  %6971 = vmatprep.subr.mxu0 0.0
  %6972 = vmatpush1.msra.mxu0 0.0
  %6973 = vmatprep.subr.mxu0 0.0
  %6974 = vmatpush1.msra.mxu0 0.0
  %6975 = vmatprep.subr.mxu0 0.0
  %6976 = vmatpush1.msra.mxu0 0.0
  %6977 = vmatprep.subr.mxu0 0.0
  %6978 = vmatpush1.msra.mxu0 0.0
  %6979 = vmatprep.subr.mxu0 0.0
  %6980 = vmatpush1.msra.mxu0 0.0
  %6981 = vmatprep.subr.mxu0 0.0
  %6982 = vmatpush1.msra.mxu0 0.0
  %6983 = vmatprep.subr.mxu0 0.0
  %6984 = vmatpush1.msra.mxu0 0.0
  %6985 = vmatprep.subr.mxu0 0.0
  %6986 = vmatpush1.msra.mxu0 0.0
  %6987 = vmatprep.subr.mxu0 0.0
  %6988 = vmatpush1.msra.mxu0 0.0
  %6989 = vmatprep.subr.mxu0 0.0
  %6990 = vmatpush1.msra.mxu0 0.0
  %6991 = vmatprep.mubr.f32.mxu0 0.0
  %6992 = vmatmul.mubr.f32.gmra.mrb[0].mxu0 %v6423
  %v6993 = vpop.f32.mrb[0].mxu0
  %v6994 = vadd.f32 0.0, %v6993
  %v6995 = vpop.f32.mrb[0].mxu0
  %v6996 = vadd.f32 0.0, %v6995
  %6997 = vdwg.mxu0
  %6998 = vmatprep.subr.mxu0 %v6455
  %6999 = vmatpush1.msra.mxu0 %v6453
  %7000 = vmatprep.subr.mxu0 0.0
  %7001 = vmatpush1.msra.mxu0 0.0
  %7002 = vmatprep.subr.mxu0 0.0
  %7003 = vmatpush1.msra.mxu0 0.0
  %7004 = vmatprep.subr.mxu0 0.0
  %7005 = vmatpush1.msra.mxu0 0.0
  %7006 = vmatprep.subr.mxu0 0.0
  %7007 = vmatpush1.msra.mxu0 0.0
  %7008 = vmatprep.subr.mxu0 0.0
  %7009 = vmatpush1.msra.mxu0 0.0
  %7010 = vmatprep.subr.mxu0 0.0
  %7011 = vmatpush1.msra.mxu0 0.0
  %7012 = vmatprep.subr.mxu0 0.0
  %7013 = vmatpush1.msra.mxu0 0.0
  %7014 = vmatprep.subr.mxu0 0.0
  %7015 = vmatpush1.msra.mxu0 0.0
  %7016 = vmatprep.subr.mxu0 0.0
  %7017 = vmatpush1.msra.mxu0 0.0
  %7018 = vmatprep.subr.mxu0 0.0
  %7019 = vmatpush1.msra.mxu0 0.0
  %7020 = vmatprep.subr.mxu0 0.0
  %7021 = vmatpush1.msra.mxu0 0.0
  %7022 = vmatprep.subr.mxu0 0.0
  %7023 = vmatpush1.msra.mxu0 0.0
  %7024 = vmatprep.subr.mxu0 0.0
  %7025 = vmatpush1.msra.mxu0 0.0
  %7026 = vmatprep.subr.mxu0 0.0
  %7027 = vmatpush1.msra.mxu0 0.0
  %7028 = vmatprep.subr.mxu0 0.0
  %7029 = vmatpush1.msra.mxu0 0.0
  %7030 = vmatprep.subr.mxu0 0.0
  %7031 = vmatpush1.msra.mxu0 0.0
  %7032 = vmatprep.subr.mxu0 0.0
  %7033 = vmatpush1.msra.mxu0 0.0
  %7034 = vmatprep.subr.mxu0 0.0
  %7035 = vmatpush1.msra.mxu0 0.0
  %7036 = vmatprep.subr.mxu0 0.0
  %7037 = vmatpush1.msra.mxu0 0.0
  %7038 = vmatprep.subr.mxu0 0.0
  %7039 = vmatpush1.msra.mxu0 0.0
  %7040 = vmatprep.subr.mxu0 0.0
  %7041 = vmatpush1.msra.mxu0 0.0
  %7042 = vmatprep.subr.mxu0 0.0
  %7043 = vmatpush1.msra.mxu0 0.0
  %7044 = vmatprep.subr.mxu0 0.0
  %7045 = vmatpush1.msra.mxu0 0.0
  %7046 = vmatprep.subr.mxu0 0.0
  %7047 = vmatpush1.msra.mxu0 0.0
  %7048 = vmatprep.subr.mxu0 0.0
  %7049 = vmatpush1.msra.mxu0 0.0
  %7050 = vmatprep.subr.mxu0 0.0
  %7051 = vmatpush1.msra.mxu0 0.0
  %7052 = vmatprep.subr.mxu0 0.0
  %7053 = vmatpush1.msra.mxu0 0.0
  %7054 = vmatprep.subr.mxu0 0.0
  %7055 = vmatpush1.msra.mxu0 0.0
  %7056 = vmatprep.subr.mxu0 0.0
  %7057 = vmatpush1.msra.mxu0 0.0
  %7058 = vmatprep.subr.mxu0 0.0
  %7059 = vmatpush1.msra.mxu0 0.0
  %7060 = vmatprep.subr.mxu0 0.0
  %7061 = vmatpush1.msra.mxu0 0.0
  %7062 = vmatprep.mubr.f32.mxu0 0.0
  %7063 = vmatmul.mubr.f32.gmra.mrb[0].mxu0 %v6423
  %v7064 = vpop.f32.mrb[0].mxu0
  %v7065 = vadd.f32 0.0, %v7064
  %v7066 = vpop.f32.mrb[0].mxu0
  %v7067 = vadd.f32 0.0, %v7066
  %7068 = vdwg.mxu0
  %7069 = vmatprep.subr.mxu0 %v6459
  %7070 = vmatpush1.msra.mxu0 %v6457
  %7071 = vmatprep.subr.mxu0 0.0
  %7072 = vmatpush1.msra.mxu0 0.0
  %7073 = vmatprep.subr.mxu0 0.0
  %7074 = vmatpush1.msra.mxu0 0.0
  %7075 = vmatprep.subr.mxu0 0.0
  %7076 = vmatpush1.msra.mxu0 0.0
  %7077 = vmatprep.subr.mxu0 0.0
  %7078 = vmatpush1.msra.mxu0 0.0
  %7079 = vmatprep.subr.mxu0 0.0
  %7080 = vmatpush1.msra.mxu0 0.0
  %7081 = vmatprep.subr.mxu0 0.0
  %7082 = vmatpush1.msra.mxu0 0.0
  %7083 = vmatprep.subr.mxu0 0.0
  %7084 = vmatpush1.msra.mxu0 0.0
  %7085 = vmatprep.subr.mxu0 0.0
  %7086 = vmatpush1.msra.mxu0 0.0
  %7087 = vmatprep.subr.mxu0 0.0
  %7088 = vmatpush1.msra.mxu0 0.0
  %7089 = vmatprep.subr.mxu0 0.0
  %7090 = vmatpush1.msra.mxu0 0.0
  %7091 = vmatprep.subr.mxu0 0.0
  %7092 = vmatpush1.msra.mxu0 0.0
  %7093 = vmatprep.subr.mxu0 0.0
  %7094 = vmatpush1.msra.mxu0 0.0
  %7095 = vmatprep.subr.mxu0 0.0
  %7096 = vmatpush1.msra.mxu0 0.0
  %7097 = vmatprep.subr.mxu0 0.0
  %7098 = vmatpush1.msra.mxu0 0.0
  %7099 = vmatprep.subr.mxu0 0.0
  %7100 = vmatpush1.msra.mxu0 0.0
  %7101 = vmatprep.subr.mxu0 0.0
  %7102 = vmatpush1.msra.mxu0 0.0
  %7103 = vmatprep.subr.mxu0 0.0
  %7104 = vmatpush1.msra.mxu0 0.0
  %7105 = vmatprep.subr.mxu0 0.0
  %7106 = vmatpush1.msra.mxu0 0.0
  %7107 = vmatprep.subr.mxu0 0.0
  %7108 = vmatpush1.msra.mxu0 0.0
  %7109 = vmatprep.subr.mxu0 0.0
  %7110 = vmatpush1.msra.mxu0 0.0
  %7111 = vmatprep.subr.mxu0 0.0
  %7112 = vmatpush1.msra.mxu0 0.0
  %7113 = vmatprep.subr.mxu0 0.0
  %7114 = vmatpush1.msra.mxu0 0.0
  %7115 = vmatprep.subr.mxu0 0.0
  %7116 = vmatpush1.msra.mxu0 0.0
  %7117 = vmatprep.subr.mxu0 0.0
  %7118 = vmatpush1.msra.mxu0 0.0
  %7119 = vmatprep.subr.mxu0 0.0
  %7120 = vmatpush1.msra.mxu0 0.0
  %7121 = vmatprep.subr.mxu0 0.0
  %7122 = vmatpush1.msra.mxu0 0.0
  %7123 = vmatprep.subr.mxu0 0.0
  %7124 = vmatpush1.msra.mxu0 0.0
  %7125 = vmatprep.subr.mxu0 0.0
  %7126 = vmatpush1.msra.mxu0 0.0
  %7127 = vmatprep.subr.mxu0 0.0
  %7128 = vmatpush1.msra.mxu0 0.0
  %7129 = vmatprep.subr.mxu0 0.0
  %7130 = vmatpush1.msra.mxu0 0.0
  %7131 = vmatprep.subr.mxu0 0.0
  %7132 = vmatpush1.msra.mxu0 0.0
  %7133 = vmatprep.mubr.f32.mxu0 0.0
  %7134 = vmatmul.mubr.f32.gmra.mrb[0].mxu0 %v6423
  %v7135 = vpop.f32.mrb[0].mxu0
  %v7136 = vadd.f32 0.0, %v7135
  %v7137 = vpop.f32.mrb[0].mxu0
  %v7138 = vadd.f32 0.0, %v7137
  %7139 = vdwg.mxu0
  %7140 = vmatprep.subr.mxu0 %v6463
  %7141 = vmatpush1.msra.mxu0 %v6461
  %7142 = vmatprep.subr.mxu0 0.0
  %7143 = vmatpush1.msra.mxu0 0.0
  %7144 = vmatprep.subr.mxu0 0.0
  %7145 = vmatpush1.msra.mxu0 0.0
  %7146 = vmatprep.subr.mxu0 0.0
  %7147 = vmatpush1.msra.mxu0 0.0
  %7148 = vmatprep.subr.mxu0 0.0
  %7149 = vmatpush1.msra.mxu0 0.0
  %7150 = vmatprep.subr.mxu0 0.0
  %7151 = vmatpush1.msra.mxu0 0.0
  %7152 = vmatprep.subr.mxu0 0.0
  %7153 = vmatpush1.msra.mxu0 0.0
  %7154 = vmatprep.subr.mxu0 0.0
  %7155 = vmatpush1.msra.mxu0 0.0
  %7156 = vmatprep.subr.mxu0 0.0
  %7157 = vmatpush1.msra.mxu0 0.0
  %7158 = vmatprep.subr.mxu0 0.0
  %7159 = vmatpush1.msra.mxu0 0.0
  %7160 = vmatprep.subr.mxu0 0.0
  %7161 = vmatpush1.msra.mxu0 0.0
  %7162 = vmatprep.subr.mxu0 0.0
  %7163 = vmatpush1.msra.mxu0 0.0
  %7164 = vmatprep.subr.mxu0 0.0
  %7165 = vmatpush1.msra.mxu0 0.0
  %7166 = vmatprep.subr.mxu0 0.0
  %7167 = vmatpush1.msra.mxu0 0.0
  %7168 = vmatprep.subr.mxu0 0.0
  %7169 = vmatpush1.msra.mxu0 0.0
  %7170 = vmatprep.subr.mxu0 0.0
  %7171 = vmatpush1.msra.mxu0 0.0
  %7172 = vmatprep.subr.mxu0 0.0
  %7173 = vmatpush1.msra.mxu0 0.0
  %7174 = vmatprep.subr.mxu0 0.0
  %7175 = vmatpush1.msra.mxu0 0.0
  %7176 = vmatprep.subr.mxu0 0.0
  %7177 = vmatpush1.msra.mxu0 0.0
  %7178 = vmatprep.subr.mxu0 0.0
  %7179 = vmatpush1.msra.mxu0 0.0
  %7180 = vmatprep.subr.mxu0 0.0
  %7181 = vmatpush1.msra.mxu0 0.0
  %7182 = vmatprep.subr.mxu0 0.0
  %7183 = vmatpush1.msra.mxu0 0.0
  %7184 = vmatprep.subr.mxu0 0.0
  %7185 = vmatpush1.msra.mxu0 0.0
  %7186 = vmatprep.subr.mxu0 0.0
  %7187 = vmatpush1.msra.mxu0 0.0
  %7188 = vmatprep.subr.mxu0 0.0
  %7189 = vmatpush1.msra.mxu0 0.0
  %7190 = vmatprep.subr.mxu0 0.0
  %7191 = vmatpush1.msra.mxu0 0.0
  %7192 = vmatprep.subr.mxu0 0.0
  %7193 = vmatpush1.msra.mxu0 0.0
  %7194 = vmatprep.subr.mxu0 0.0
  %7195 = vmatpush1.msra.mxu0 0.0
  %7196 = vmatprep.subr.mxu0 0.0
  %7197 = vmatpush1.msra.mxu0 0.0
  %7198 = vmatprep.subr.mxu0 0.0
  %7199 = vmatpush1.msra.mxu0 0.0
  %7200 = vmatprep.subr.mxu0 0.0
  %7201 = vmatpush1.msra.mxu0 0.0
  %7202 = vmatprep.subr.mxu0 0.0
  %7203 = vmatpush1.msra.mxu0 0.0
  %7204 = vmatprep.mubr.f32.mxu0 0.0
  %7205 = vmatmul.mubr.f32.gmra.mrb[0].mxu0 %v6423
  %v7206 = vpop.f32.mrb[0].mxu0
  %v7207 = vadd.f32 0.0, %v7206
  %v7208 = vpop.f32.mrb[0].mxu0
  %v7209 = vadd.f32 0.0, %v7208
  %7210 = vdwg.mxu0
  %7211 = vmatprep.subr.mxu0 %v6467
  %7212 = vmatpush1.msra.mxu0 %v6465
  %7213 = vmatprep.subr.mxu0 0.0
  %7214 = vmatpush1.msra.mxu0 0.0
  %7215 = vmatprep.subr.mxu0 0.0
  %7216 = vmatpush1.msra.mxu0 0.0
  %7217 = vmatprep.subr.mxu0 0.0
  %7218 = vmatpush1.msra.mxu0 0.0
  %7219 = vmatprep.subr.mxu0 0.0
  %7220 = vmatpush1.msra.mxu0 0.0
  %7221 = vmatprep.subr.mxu0 0.0
  %7222 = vmatpush1.msra.mxu0 0.0
  %7223 = vmatprep.subr.mxu0 0.0
  %7224 = vmatpush1.msra.mxu0 0.0
  %7225 = vmatprep.subr.mxu0 0.0
  %7226 = vmatpush1.msra.mxu0 0.0
  %7227 = vmatprep.subr.mxu0 0.0
  %7228 = vmatpush1.msra.mxu0 0.0
  %7229 = vmatprep.subr.mxu0 0.0
  %7230 = vmatpush1.msra.mxu0 0.0
  %7231 = vmatprep.subr.mxu0 0.0
  %7232 = vmatpush1.msra.mxu0 0.0
  %7233 = vmatprep.subr.mxu0 0.0
  %7234 = vmatpush1.msra.mxu0 0.0
  %7235 = vmatprep.subr.mxu0 0.0
  %7236 = vmatpush1.msra.mxu0 0.0
  %7237 = vmatprep.subr.mxu0 0.0
  %7238 = vmatpush1.msra.mxu0 0.0
  %7239 = vmatprep.subr.mxu0 0.0
  %7240 = vmatpush1.msra.mxu0 0.0
  %7241 = vmatprep.subr.mxu0 0.0
  %7242 = vmatpush1.msra.mxu0 0.0
  %7243 = vmatprep.subr.mxu0 0.0
  %7244 = vmatpush1.msra.mxu0 0.0
  %7245 = vmatprep.subr.mxu0 0.0
  %7246 = vmatpush1.msra.mxu0 0.0
  %7247 = vmatprep.subr.mxu0 0.0
  %7248 = vmatpush1.msra.mxu0 0.0
  %7249 = vmatprep.subr.mxu0 0.0
  %7250 = vmatpush1.msra.mxu0 0.0
  %7251 = vmatprep.subr.mxu0 0.0
  %7252 = vmatpush1.msra.mxu0 0.0
  %7253 = vmatprep.subr.mxu0 0.0
  %7254 = vmatpush1.msra.mxu0 0.0
  %7255 = vmatprep.subr.mxu0 0.0
  %7256 = vmatpush1.msra.mxu0 0.0
  %7257 = vmatprep.subr.mxu0 0.0
  %7258 = vmatpush1.msra.mxu0 0.0
  %7259 = vmatprep.subr.mxu0 0.0
  %7260 = vmatpush1.msra.mxu0 0.0
  %7261 = vmatprep.subr.mxu0 0.0
  %7262 = vmatpush1.msra.mxu0 0.0
  %7263 = vmatprep.subr.mxu0 0.0
  %7264 = vmatpush1.msra.mxu0 0.0
  %7265 = vmatprep.subr.mxu0 0.0
  %7266 = vmatpush1.msra.mxu0 0.0
  %7267 = vmatprep.subr.mxu0 0.0
  %7268 = vmatpush1.msra.mxu0 0.0
  %7269 = vmatprep.subr.mxu0 0.0
  %7270 = vmatpush1.msra.mxu0 0.0
  %7271 = vmatprep.subr.mxu0 0.0
  %7272 = vmatpush1.msra.mxu0 0.0
  %7273 = vmatprep.subr.mxu0 0.0
  %7274 = vmatpush1.msra.mxu0 0.0
  %7275 = vmatprep.mubr.f32.mxu0 0.0
  %7276 = vmatmul.mubr.f32.gmra.mrb[0].mxu0 %v6423
  %v7277 = vpop.f32.mrb[0].mxu0
  %v7278 = vadd.f32 0.0, %v7277
  %v7279 = vpop.f32.mrb[0].mxu0
  %v7280 = vadd.f32 0.0, %v7279
  %7281 = vdwg.mxu0
  %7282 = vmatprep.subr.mxu0 %v6471
  %7283 = vmatpush1.msra.mxu0 %v6469
  %7284 = vmatprep.subr.mxu0 0.0
  %7285 = vmatpush1.msra.mxu0 0.0
  %7286 = vmatprep.subr.mxu0 0.0
  %7287 = vmatpush1.msra.mxu0 0.0
  %7288 = vmatprep.subr.mxu0 0.0
  %7289 = vmatpush1.msra.mxu0 0.0
  %7290 = vmatprep.subr.mxu0 0.0
  %7291 = vmatpush1.msra.mxu0 0.0
  %7292 = vmatprep.subr.mxu0 0.0
  %7293 = vmatpush1.msra.mxu0 0.0
  %7294 = vmatprep.subr.mxu0 0.0
  %7295 = vmatpush1.msra.mxu0 0.0
  %7296 = vmatprep.subr.mxu0 0.0
  %7297 = vmatpush1.msra.mxu0 0.0
  %7298 = vmatprep.subr.mxu0 0.0
  %7299 = vmatpush1.msra.mxu0 0.0
  %7300 = vmatprep.subr.mxu0 0.0
  %7301 = vmatpush1.msra.mxu0 0.0
  %7302 = vmatprep.subr.mxu0 0.0
  %7303 = vmatpush1.msra.mxu0 0.0
  %7304 = vmatprep.subr.mxu0 0.0
  %7305 = vmatpush1.msra.mxu0 0.0
  %7306 = vmatprep.subr.mxu0 0.0
  %7307 = vmatpush1.msra.mxu0 0.0
  %7308 = vmatprep.subr.mxu0 0.0
  %7309 = vmatpush1.msra.mxu0 0.0
  %7310 = vmatprep.subr.mxu0 0.0
  %7311 = vmatpush1.msra.mxu0 0.0
  %7312 = vmatprep.subr.mxu0 0.0
  %7313 = vmatpush1.msra.mxu0 0.0
  %7314 = vmatprep.subr.mxu0 0.0
  %7315 = vmatpush1.msra.mxu0 0.0
  %7316 = vmatprep.subr.mxu0 0.0
  %7317 = vmatpush1.msra.mxu0 0.0
  %7318 = vmatprep.subr.mxu0 0.0
  %7319 = vmatpush1.msra.mxu0 0.0
  %7320 = vmatprep.subr.mxu0 0.0
  %7321 = vmatpush1.msra.mxu0 0.0
  %7322 = vmatprep.subr.mxu0 0.0
  %7323 = vmatpush1.msra.mxu0 0.0
  %7324 = vmatprep.subr.mxu0 0.0
  %7325 = vmatpush1.msra.mxu0 0.0
  %7326 = vmatprep.subr.mxu0 0.0
  %7327 = vmatpush1.msra.mxu0 0.0
  %7328 = vmatprep.subr.mxu0 0.0
  %7329 = vmatpush1.msra.mxu0 0.0
  %7330 = vmatprep.subr.mxu0 0.0
  %7331 = vmatpush1.msra.mxu0 0.0
  %7332 = vmatprep.subr.mxu0 0.0
  %7333 = vmatpush1.msra.mxu0 0.0
  %7334 = vmatprep.subr.mxu0 0.0
  %7335 = vmatpush1.msra.mxu0 0.0
  %7336 = vmatprep.subr.mxu0 0.0
  %7337 = vmatpush1.msra.mxu0 0.0
  %7338 = vmatprep.subr.mxu0 0.0
  %7339 = vmatpush1.msra.mxu0 0.0
  %7340 = vmatprep.subr.mxu0 0.0
  %7341 = vmatpush1.msra.mxu0 0.0
  %7342 = vmatprep.subr.mxu0 0.0
  %7343 = vmatpush1.msra.mxu0 0.0
  %7344 = vmatprep.subr.mxu0 0.0
  %7345 = vmatpush1.msra.mxu0 0.0
  %7346 = vmatprep.mubr.f32.mxu0 0.0
  %7347 = vmatmul.mubr.f32.gmra.mrb[0].mxu0 %v6423
  %v7348 = vpop.f32.mrb[0].mxu0
  %v7349 = vadd.f32 0.0, %v7348
  %v7350 = vpop.f32.mrb[0].mxu0
  %v7351 = vadd.f32 0.0, %v7350
  %7352 = vdwg.mxu0
  %7353 = vmatprep.subr.mxu0 %v6475
  %7354 = vmatpush1.msra.mxu0 %v6473
  %7355 = vmatprep.subr.mxu0 0.0
  %7356 = vmatpush1.msra.mxu0 0.0
  %7357 = vmatprep.subr.mxu0 0.0
  %7358 = vmatpush1.msra.mxu0 0.0
  %7359 = vmatprep.subr.mxu0 0.0
  %7360 = vmatpush1.msra.mxu0 0.0
  %7361 = vmatprep.subr.mxu0 0.0
  %7362 = vmatpush1.msra.mxu0 0.0
  %7363 = vmatprep.subr.mxu0 0.0
  %7364 = vmatpush1.msra.mxu0 0.0
  %7365 = vmatprep.subr.mxu0 0.0
  %7366 = vmatpush1.msra.mxu0 0.0
  %7367 = vmatprep.subr.mxu0 0.0
  %7368 = vmatpush1.msra.mxu0 0.0
  %7369 = vmatprep.subr.mxu0 0.0
  %7370 = vmatpush1.msra.mxu0 0.0
  %7371 = vmatprep.subr.mxu0 0.0
  %7372 = vmatpush1.msra.mxu0 0.0
  %7373 = vmatprep.subr.mxu0 0.0
  %7374 = vmatpush1.msra.mxu0 0.0
  %7375 = vmatprep.subr.mxu0 0.0
  %7376 = vmatpush1.msra.mxu0 0.0
  %7377 = vmatprep.subr.mxu0 0.0
  %7378 = vmatpush1.msra.mxu0 0.0
  %7379 = vmatprep.subr.mxu0 0.0
  %7380 = vmatpush1.msra.mxu0 0.0
  %7381 = vmatprep.subr.mxu0 0.0
  %7382 = vmatpush1.msra.mxu0 0.0
  %7383 = vmatprep.subr.mxu0 0.0
  %7384 = vmatpush1.msra.mxu0 0.0
  %7385 = vmatprep.subr.mxu0 0.0
  %7386 = vmatpush1.msra.mxu0 0.0
  %7387 = vmatprep.subr.mxu0 0.0
  %7388 = vmatpush1.msra.mxu0 0.0
  %7389 = vmatprep.subr.mxu0 0.0
  %7390 = vmatpush1.msra.mxu0 0.0
  %7391 = vmatprep.subr.mxu0 0.0
  %7392 = vmatpush1.msra.mxu0 0.0
  %7393 = vmatprep.subr.mxu0 0.0
  %7394 = vmatpush1.msra.mxu0 0.0
  %7395 = vmatprep.subr.mxu0 0.0
  %7396 = vmatpush1.msra.mxu0 0.0
  %7397 = vmatprep.subr.mxu0 0.0
  %7398 = vmatpush1.msra.mxu0 0.0
  %7399 = vmatprep.subr.mxu0 0.0
  %7400 = vmatpush1.msra.mxu0 0.0
  %7401 = vmatprep.subr.mxu0 0.0
  %7402 = vmatpush1.msra.mxu0 0.0
  %7403 = vmatprep.subr.mxu0 0.0
  %7404 = vmatpush1.msra.mxu0 0.0
  %7405 = vmatprep.subr.mxu0 0.0
  %7406 = vmatpush1.msra.mxu0 0.0
  %7407 = vmatprep.subr.mxu0 0.0
  %7408 = vmatpush1.msra.mxu0 0.0
  %7409 = vmatprep.subr.mxu0 0.0
  %7410 = vmatpush1.msra.mxu0 0.0
  %7411 = vmatprep.subr.mxu0 0.0
  %7412 = vmatpush1.msra.mxu0 0.0
  %7413 = vmatprep.subr.mxu0 0.0
  %7414 = vmatpush1.msra.mxu0 0.0
  %7415 = vmatprep.subr.mxu0 0.0
  %7416 = vmatpush1.msra.mxu0 0.0
  %7417 = vmatprep.mubr.f32.mxu0 0.0
  %7418 = vmatmul.mubr.f32.gmra.mrb[0].mxu0 %v6423
  %v7419 = vpop.f32.mrb[0].mxu0
  %v7420 = vadd.f32 0.0, %v7419
  %v7421 = vpop.f32.mrb[0].mxu0
  %v7422 = vadd.f32 0.0, %v7421
  %7423 = vdwg.mxu0
  %7424 = vmatprep.subr.mxu0 %v6479
  %7425 = vmatpush1.msra.mxu0 %v6477
  %7426 = vmatprep.subr.mxu0 0.0
  %7427 = vmatpush1.msra.mxu0 0.0
  %7428 = vmatprep.subr.mxu0 0.0
  %7429 = vmatpush1.msra.mxu0 0.0
  %7430 = vmatprep.subr.mxu0 0.0
  %7431 = vmatpush1.msra.mxu0 0.0
  %7432 = vmatprep.subr.mxu0 0.0
  %7433 = vmatpush1.msra.mxu0 0.0
  %7434 = vmatprep.subr.mxu0 0.0
  %7435 = vmatpush1.msra.mxu0 0.0
  %7436 = vmatprep.subr.mxu0 0.0
  %7437 = vmatpush1.msra.mxu0 0.0
  %7438 = vmatprep.subr.mxu0 0.0
  %7439 = vmatpush1.msra.mxu0 0.0
  %7440 = vmatprep.subr.mxu0 0.0
  %7441 = vmatpush1.msra.mxu0 0.0
  %7442 = vmatprep.subr.mxu0 0.0
  %7443 = vmatpush1.msra.mxu0 0.0
  %7444 = vmatprep.subr.mxu0 0.0
  %7445 = vmatpush1.msra.mxu0 0.0
  %7446 = vmatprep.subr.mxu0 0.0
  %7447 = vmatpush1.msra.mxu0 0.0
  %7448 = vmatprep.subr.mxu0 0.0
  %7449 = vmatpush1.msra.mxu0 0.0
  %7450 = vmatprep.subr.mxu0 0.0
  %7451 = vmatpush1.msra.mxu0 0.0
  %7452 = vmatprep.subr.mxu0 0.0
  %7453 = vmatpush1.msra.mxu0 0.0
  %7454 = vmatprep.subr.mxu0 0.0
  %7455 = vmatpush1.msra.mxu0 0.0
  %7456 = vmatprep.subr.mxu0 0.0
  %7457 = vmatpush1.msra.mxu0 0.0
  %7458 = vmatprep.subr.mxu0 0.0
  %7459 = vmatpush1.msra.mxu0 0.0
  %7460 = vmatprep.subr.mxu0 0.0
  %7461 = vmatpush1.msra.mxu0 0.0
  %7462 = vmatprep.subr.mxu0 0.0
  %7463 = vmatpush1.msra.mxu0 0.0
  %7464 = vmatprep.subr.mxu0 0.0
  %7465 = vmatpush1.msra.mxu0 0.0
  %7466 = vmatprep.subr.mxu0 0.0
  %7467 = vmatpush1.msra.mxu0 0.0
  %7468 = vmatprep.subr.mxu0 0.0
  %7469 = vmatpush1.msra.mxu0 0.0
  %7470 = vmatprep.subr.mxu0 0.0
  %7471 = vmatpush1.msra.mxu0 0.0
  %7472 = vmatprep.subr.mxu0 0.0
  %7473 = vmatpush1.msra.mxu0 0.0
  %7474 = vmatprep.subr.mxu0 0.0
  %7475 = vmatpush1.msra.mxu0 0.0
  %7476 = vmatprep.subr.mxu0 0.0
  %7477 = vmatpush1.msra.mxu0 0.0
  %7478 = vmatprep.subr.mxu0 0.0
  %7479 = vmatpush1.msra.mxu0 0.0
  %7480 = vmatprep.subr.mxu0 0.0
  %7481 = vmatpush1.msra.mxu0 0.0
  %7482 = vmatprep.subr.mxu0 0.0
  %7483 = vmatpush1.msra.mxu0 0.0
  %7484 = vmatprep.subr.mxu0 0.0
  %7485 = vmatpush1.msra.mxu0 0.0
  %7486 = vmatprep.subr.mxu0 0.0
  %7487 = vmatpush1.msra.mxu0 0.0
  %7488 = vmatprep.mubr.f32.mxu0 0.0
  %7489 = vmatmul.mubr.f32.gmra.mrb[0].mxu0 %v6423
  %v7490 = vpop.f32.mrb[0].mxu0
  %v7491 = vadd.f32 0.0, %v7490
  %v7492 = vpop.f32.mrb[0].mxu0
  %v7493 = vadd.f32 0.0, %v7492
  %7494 = vdwg.mxu0
  %7495 = vmatprep.subr.mxu0 %v6483
  %7496 = vmatpush1.msra.mxu0 %v6481
  %7497 = vmatprep.subr.mxu0 0.0
  %7498 = vmatpush1.msra.mxu0 0.0
  %7499 = vmatprep.subr.mxu0 0.0
  %7500 = vmatpush1.msra.mxu0 0.0
  %7501 = vmatprep.subr.mxu0 0.0
  %7502 = vmatpush1.msra.mxu0 0.0
  %7503 = vmatprep.subr.mxu0 0.0
  %7504 = vmatpush1.msra.mxu0 0.0
  %7505 = vmatprep.subr.mxu0 0.0
  %7506 = vmatpush1.msra.mxu0 0.0
  %7507 = vmatprep.subr.mxu0 0.0
  %7508 = vmatpush1.msra.mxu0 0.0
  %7509 = vmatprep.subr.mxu0 0.0
  %7510 = vmatpush1.msra.mxu0 0.0
  %7511 = vmatprep.subr.mxu0 0.0
  %7512 = vmatpush1.msra.mxu0 0.0
  %7513 = vmatprep.subr.mxu0 0.0
  %7514 = vmatpush1.msra.mxu0 0.0
  %7515 = vmatprep.subr.mxu0 0.0
  %7516 = vmatpush1.msra.mxu0 0.0
  %7517 = vmatprep.subr.mxu0 0.0
  %7518 = vmatpush1.msra.mxu0 0.0
  %7519 = vmatprep.subr.mxu0 0.0
  %7520 = vmatpush1.msra.mxu0 0.0
  %7521 = vmatprep.subr.mxu0 0.0
  %7522 = vmatpush1.msra.mxu0 0.0
  %7523 = vmatprep.subr.mxu0 0.0
  %7524 = vmatpush1.msra.mxu0 0.0
  %7525 = vmatprep.subr.mxu0 0.0
  %7526 = vmatpush1.msra.mxu0 0.0
  %7527 = vmatprep.subr.mxu0 0.0
  %7528 = vmatpush1.msra.mxu0 0.0
  %7529 = vmatprep.subr.mxu0 0.0
  %7530 = vmatpush1.msra.mxu0 0.0
  %7531 = vmatprep.subr.mxu0 0.0
  %7532 = vmatpush1.msra.mxu0 0.0
  %7533 = vmatprep.subr.mxu0 0.0
  %7534 = vmatpush1.msra.mxu0 0.0
  %7535 = vmatprep.subr.mxu0 0.0
  %7536 = vmatpush1.msra.mxu0 0.0
  %7537 = vmatprep.subr.mxu0 0.0
  %7538 = vmatpush1.msra.mxu0 0.0
  %7539 = vmatprep.subr.mxu0 0.0
  %7540 = vmatpush1.msra.mxu0 0.0
  %7541 = vmatprep.subr.mxu0 0.0
  %7542 = vmatpush1.msra.mxu0 0.0
  %7543 = vmatprep.subr.mxu0 0.0
  %7544 = vmatpush1.msra.mxu0 0.0
  %7545 = vmatprep.subr.mxu0 0.0
  %7546 = vmatpush1.msra.mxu0 0.0
  %7547 = vmatprep.subr.mxu0 0.0
  %7548 = vmatpush1.msra.mxu0 0.0
  %7549 = vmatprep.subr.mxu0 0.0
  %7550 = vmatpush1.msra.mxu0 0.0
  %7551 = vmatprep.subr.mxu0 0.0
  %7552 = vmatpush1.msra.mxu0 0.0
  %7553 = vmatprep.subr.mxu0 0.0
  %7554 = vmatpush1.msra.mxu0 0.0
  %7555 = vmatprep.subr.mxu0 0.0
  %7556 = vmatpush1.msra.mxu0 0.0
  %7557 = vmatprep.subr.mxu0 0.0
  %7558 = vmatpush1.msra.mxu0 0.0
  %7559 = vmatprep.mubr.f32.mxu0 0.0
  %7560 = vmatmul.mubr.f32.gmra.mrb[0].mxu0 %v6423
  %v7561 = vpop.f32.mrb[0].mxu0
  %v7562 = vadd.f32 0.0, %v7561
  %v7563 = vpop.f32.mrb[0].mxu0
  %v7564 = vadd.f32 0.0, %v7563
  %7565 = vdwg.mxu0
  %7566 = vmatprep.subr.mxu0 %v6487
  %7567 = vmatpush1.msra.mxu0 %v6485
  %7568 = vmatprep.subr.mxu0 0.0
  %7569 = vmatpush1.msra.mxu0 0.0
  %7570 = vmatprep.subr.mxu0 0.0
  %7571 = vmatpush1.msra.mxu0 0.0
  %7572 = vmatprep.subr.mxu0 0.0
  %7573 = vmatpush1.msra.mxu0 0.0
  %7574 = vmatprep.subr.mxu0 0.0
  %7575 = vmatpush1.msra.mxu0 0.0
  %7576 = vmatprep.subr.mxu0 0.0
  %7577 = vmatpush1.msra.mxu0 0.0
  %7578 = vmatprep.subr.mxu0 0.0
  %7579 = vmatpush1.msra.mxu0 0.0
  %7580 = vmatprep.subr.mxu0 0.0
  %7581 = vmatpush1.msra.mxu0 0.0
  %7582 = vmatprep.subr.mxu0 0.0
  %7583 = vmatpush1.msra.mxu0 0.0
  %7584 = vmatprep.subr.mxu0 0.0
  %7585 = vmatpush1.msra.mxu0 0.0
  %7586 = vmatprep.subr.mxu0 0.0
  %7587 = vmatpush1.msra.mxu0 0.0
  %7588 = vmatprep.subr.mxu0 0.0
  %7589 = vmatpush1.msra.mxu0 0.0
  %7590 = vmatprep.subr.mxu0 0.0
  %7591 = vmatpush1.msra.mxu0 0.0
  %7592 = vmatprep.subr.mxu0 0.0
  %7593 = vmatpush1.msra.mxu0 0.0
  %7594 = vmatprep.subr.mxu0 0.0
  %7595 = vmatpush1.msra.mxu0 0.0
  %7596 = vmatprep.subr.mxu0 0.0
  %7597 = vmatpush1.msra.mxu0 0.0
  %7598 = vmatprep.subr.mxu0 0.0
  %7599 = vmatpush1.msra.mxu0 0.0
  %7600 = vmatprep.subr.mxu0 0.0
  %7601 = vmatpush1.msra.mxu0 0.0
  %7602 = vmatprep.subr.mxu0 0.0
  %7603 = vmatpush1.msra.mxu0 0.0
  %7604 = vmatprep.subr.mxu0 0.0
  %7605 = vmatpush1.msra.mxu0 0.0
  %7606 = vmatprep.subr.mxu0 0.0
  %7607 = vmatpush1.msra.mxu0 0.0
  %7608 = vmatprep.subr.mxu0 0.0
  %7609 = vmatpush1.msra.mxu0 0.0
  %7610 = vmatprep.subr.mxu0 0.0
  %7611 = vmatpush1.msra.mxu0 0.0
  %7612 = vmatprep.subr.mxu0 0.0
  %7613 = vmatpush1.msra.mxu0 0.0
  %7614 = vmatprep.subr.mxu0 0.0
  %7615 = vmatpush1.msra.mxu0 0.0
  %7616 = vmatprep.subr.mxu0 0.0
  %7617 = vmatpush1.msra.mxu0 0.0
  %7618 = vmatprep.subr.mxu0 0.0
  %7619 = vmatpush1.msra.mxu0 0.0
  %7620 = vmatprep.subr.mxu0 0.0
  %7621 = vmatpush1.msra.mxu0 0.0
  %7622 = vmatprep.subr.mxu0 0.0
  %7623 = vmatpush1.msra.mxu0 0.0
  %7624 = vmatprep.subr.mxu0 0.0
  %7625 = vmatpush1.msra.mxu0 0.0
  %7626 = vmatprep.subr.mxu0 0.0
  %7627 = vmatpush1.msra.mxu0 0.0
  %7628 = vmatprep.subr.mxu0 0.0
  %7629 = vmatpush1.msra.mxu0 0.0
  %7630 = vmatprep.mubr.f32.mxu0 0.0
  %7631 = vmatmul.mubr.f32.gmra.mrb[0].mxu0 %v6423
  %v7632 = vpop.f32.mrb[0].mxu0
  %v7633 = vadd.f32 0.0, %v7632
  %v7634 = vpop.f32.mrb[0].mxu0
  %v7635 = vadd.f32 0.0, %v7634
  %7636 = vdwg.mxu0
  %7637 = vmatprep.subr.mxu0 %v6491
  %7638 = vmatpush1.msra.mxu0 %v6489
  %7639 = vmatprep.subr.mxu0 0.0
  %7640 = vmatpush1.msra.mxu0 0.0
  %7641 = vmatprep.subr.mxu0 0.0
  %7642 = vmatpush1.msra.mxu0 0.0
  %7643 = vmatprep.subr.mxu0 0.0
  %7644 = vmatpush1.msra.mxu0 0.0
  %7645 = vmatprep.subr.mxu0 0.0
  %7646 = vmatpush1.msra.mxu0 0.0
  %7647 = vmatprep.subr.mxu0 0.0
  %7648 = vmatpush1.msra.mxu0 0.0
  %7649 = vmatprep.subr.mxu0 0.0
  %7650 = vmatpush1.msra.mxu0 0.0
  %7651 = vmatprep.subr.mxu0 0.0
  %7652 = vmatpush1.msra.mxu0 0.0
  %7653 = vmatprep.subr.mxu0 0.0
  %7654 = vmatpush1.msra.mxu0 0.0
  %7655 = vmatprep.subr.mxu0 0.0
  %7656 = vmatpush1.msra.mxu0 0.0
  %7657 = vmatprep.subr.mxu0 0.0
  %7658 = vmatpush1.msra.mxu0 0.0
  %7659 = vmatprep.subr.mxu0 0.0
  %7660 = vmatpush1.msra.mxu0 0.0
  %7661 = vmatprep.subr.mxu0 0.0
  %7662 = vmatpush1.msra.mxu0 0.0
  %7663 = vmatprep.subr.mxu0 0.0
  %7664 = vmatpush1.msra.mxu0 0.0
  %7665 = vmatprep.subr.mxu0 0.0
  %7666 = vmatpush1.msra.mxu0 0.0
  %7667 = vmatprep.subr.mxu0 0.0
  %7668 = vmatpush1.msra.mxu0 0.0
  %7669 = vmatprep.subr.mxu0 0.0
  %7670 = vmatpush1.msra.mxu0 0.0
  %7671 = vmatprep.subr.mxu0 0.0
  %7672 = vmatpush1.msra.mxu0 0.0
  %7673 = vmatprep.subr.mxu0 0.0
  %7674 = vmatpush1.msra.mxu0 0.0
  %7675 = vmatprep.subr.mxu0 0.0
  %7676 = vmatpush1.msra.mxu0 0.0
  %7677 = vmatprep.subr.mxu0 0.0
  %7678 = vmatpush1.msra.mxu0 0.0
  %7679 = vmatprep.subr.mxu0 0.0
  %7680 = vmatpush1.msra.mxu0 0.0
  %7681 = vmatprep.subr.mxu0 0.0
  %7682 = vmatpush1.msra.mxu0 0.0
  %7683 = vmatprep.subr.mxu0 0.0
  %7684 = vmatpush1.msra.mxu0 0.0
  %7685 = vmatprep.subr.mxu0 0.0
  %7686 = vmatpush1.msra.mxu0 0.0
  %7687 = vmatprep.subr.mxu0 0.0
  %7688 = vmatpush1.msra.mxu0 0.0
  %7689 = vmatprep.subr.mxu0 0.0
  %7690 = vmatpush1.msra.mxu0 0.0
  %7691 = vmatprep.subr.mxu0 0.0
  %7692 = vmatpush1.msra.mxu0 0.0
  %7693 = vmatprep.subr.mxu0 0.0
  %7694 = vmatpush1.msra.mxu0 0.0
  %7695 = vmatprep.subr.mxu0 0.0
  %7696 = vmatpush1.msra.mxu0 0.0
  %7697 = vmatprep.subr.mxu0 0.0
  %7698 = vmatpush1.msra.mxu0 0.0
  %7699 = vmatprep.subr.mxu0 0.0
  %7700 = vmatpush1.msra.mxu0 0.0
  %7701 = vmatprep.mubr.f32.mxu0 0.0
  %7702 = vmatmul.mubr.f32.gmra.mrb[0].mxu0 %v6423
  %v7703 = vpop.f32.mrb[0].mxu0
  %v7704 = vadd.f32 0.0, %v7703
  %v7705 = vpop.f32.mrb[0].mxu0
  %v7706 = vadd.f32 0.0, %v7705
  %7707 = vdwg.mxu0
  %7708 = vmatprep.subr.mxu0 %v6495
  %7709 = vmatpush1.msra.mxu0 %v6493
  %7710 = vmatprep.subr.mxu0 0.0
  %7711 = vmatpush1.msra.mxu0 0.0
  %7712 = vmatprep.subr.mxu0 0.0
  %7713 = vmatpush1.msra.mxu0 0.0
  %7714 = vmatprep.subr.mxu0 0.0
  %7715 = vmatpush1.msra.mxu0 0.0
  %7716 = vmatprep.subr.mxu0 0.0
  %7717 = vmatpush1.msra.mxu0 0.0
  %7718 = vmatprep.subr.mxu0 0.0
  %7719 = vmatpush1.msra.mxu0 0.0
  %7720 = vmatprep.subr.mxu0 0.0
  %7721 = vmatpush1.msra.mxu0 0.0
  %7722 = vmatprep.subr.mxu0 0.0
  %7723 = vmatpush1.msra.mxu0 0.0
  %7724 = vmatprep.subr.mxu0 0.0
  %7725 = vmatpush1.msra.mxu0 0.0
  %7726 = vmatprep.subr.mxu0 0.0
  %7727 = vmatpush1.msra.mxu0 0.0
  %7728 = vmatprep.subr.mxu0 0.0
  %7729 = vmatpush1.msra.mxu0 0.0
  %7730 = vmatprep.subr.mxu0 0.0
  %7731 = vmatpush1.msra.mxu0 0.0
  %7732 = vmatprep.subr.mxu0 0.0
  %7733 = vmatpush1.msra.mxu0 0.0
  %7734 = vmatprep.subr.mxu0 0.0
  %7735 = vmatpush1.msra.mxu0 0.0
  %7736 = vmatprep.subr.mxu0 0.0
  %7737 = vmatpush1.msra.mxu0 0.0
  %7738 = vmatprep.subr.mxu0 0.0
  %7739 = vmatpush1.msra.mxu0 0.0
  %7740 = vmatprep.subr.mxu0 0.0
  %7741 = vmatpush1.msra.mxu0 0.0
  %7742 = vmatprep.subr.mxu0 0.0
  %7743 = vmatpush1.msra.mxu0 0.0
  %7744 = vmatprep.subr.mxu0 0.0
  %7745 = vmatpush1.msra.mxu0 0.0
  %7746 = vmatprep.subr.mxu0 0.0
  %7747 = vmatpush1.msra.mxu0 0.0
  %7748 = vmatprep.subr.mxu0 0.0
  %7749 = vmatpush1.msra.mxu0 0.0
  %7750 = vmatprep.subr.mxu0 0.0
  %7751 = vmatpush1.msra.mxu0 0.0
  %7752 = vmatprep.subr.mxu0 0.0
  %7753 = vmatpush1.msra.mxu0 0.0
  %7754 = vmatprep.subr.mxu0 0.0
  %7755 = vmatpush1.msra.mxu0 0.0
  %7756 = vmatprep.subr.mxu0 0.0
  %7757 = vmatpush1.msra.mxu0 0.0
  %7758 = vmatprep.subr.mxu0 0.0
  %7759 = vmatpush1.msra.mxu0 0.0
  %7760 = vmatprep.subr.mxu0 0.0
  %7761 = vmatpush1.msra.mxu0 0.0
  %7762 = vmatprep.subr.mxu0 0.0
  %7763 = vmatpush1.msra.mxu0 0.0
  %7764 = vmatprep.subr.mxu0 0.0
  %7765 = vmatpush1.msra.mxu0 0.0
  %7766 = vmatprep.subr.mxu0 0.0
  %7767 = vmatpush1.msra.mxu0 0.0
  %7768 = vmatprep.subr.mxu0 0.0
  %7769 = vmatpush1.msra.mxu0 0.0
  %7770 = vmatprep.subr.mxu0 0.0
  %7771 = vmatpush1.msra.mxu0 0.0
  %7772 = vmatprep.mubr.f32.mxu0 0.0
  %7773 = vmatmul.mubr.f32.gmra.mrb[0].mxu0 %v6423
  %v7774 = vpop.f32.mrb[0].mxu0
  %v7775 = vadd.f32 0.0, %v7774
  %v7776 = vpop.f32.mrb[0].mxu0
  %v7777 = vadd.f32 0.0, %v7776
  %7778 = vdwg.mxu0
  %7779 = vmatprep.subr.mxu0 %v6499
  %7780 = vmatpush1.msra.mxu0 %v6497
  %7781 = vmatprep.subr.mxu0 0.0
  %7782 = vmatpush1.msra.mxu0 0.0
  %7783 = vmatprep.subr.mxu0 0.0
  %7784 = vmatpush1.msra.mxu0 0.0
  %7785 = vmatprep.subr.mxu0 0.0
  %7786 = vmatpush1.msra.mxu0 0.0
  %7787 = vmatprep.subr.mxu0 0.0
  %7788 = vmatpush1.msra.mxu0 0.0
  %7789 = vmatprep.subr.mxu0 0.0
  %7790 = vmatpush1.msra.mxu0 0.0
  %7791 = vmatprep.subr.mxu0 0.0
  %7792 = vmatpush1.msra.mxu0 0.0
  %7793 = vmatprep.subr.mxu0 0.0
  %7794 = vmatpush1.msra.mxu0 0.0
  %7795 = vmatprep.subr.mxu0 0.0
  %7796 = vmatpush1.msra.mxu0 0.0
  %7797 = vmatprep.subr.mxu0 0.0
  %7798 = vmatpush1.msra.mxu0 0.0
  %7799 = vmatprep.subr.mxu0 0.0
  %7800 = vmatpush1.msra.mxu0 0.0
  %7801 = vmatprep.subr.mxu0 0.0
  %7802 = vmatpush1.msra.mxu0 0.0
  %7803 = vmatprep.subr.mxu0 0.0
  %7804 = vmatpush1.msra.mxu0 0.0
  %7805 = vmatprep.subr.mxu0 0.0
  %7806 = vmatpush1.msra.mxu0 0.0
  %7807 = vmatprep.subr.mxu0 0.0
  %7808 = vmatpush1.msra.mxu0 0.0
  %7809 = vmatprep.subr.mxu0 0.0
  %7810 = vmatpush1.msra.mxu0 0.0
  %7811 = vmatprep.subr.mxu0 0.0
  %7812 = vmatpush1.msra.mxu0 0.0
  %7813 = vmatprep.subr.mxu0 0.0
  %7814 = vmatpush1.msra.mxu0 0.0
  %7815 = vmatprep.subr.mxu0 0.0
  %7816 = vmatpush1.msra.mxu0 0.0
  %7817 = vmatprep.subr.mxu0 0.0
  %7818 = vmatpush1.msra.mxu0 0.0
  %7819 = vmatprep.subr.mxu0 0.0
  %7820 = vmatpush1.msra.mxu0 0.0
  %7821 = vmatprep.subr.mxu0 0.0
  %7822 = vmatpush1.msra.mxu0 0.0
  %7823 = vmatprep.subr.mxu0 0.0
  %7824 = vmatpush1.msra.mxu0 0.0
  %7825 = vmatprep.subr.mxu0 0.0
  %7826 = vmatpush1.msra.mxu0 0.0
  %7827 = vmatprep.subr.mxu0 0.0
  %7828 = vmatpush1.msra.mxu0 0.0
  %7829 = vmatprep.subr.mxu0 0.0
  %7830 = vmatpush1.msra.mxu0 0.0
  %7831 = vmatprep.subr.mxu0 0.0
  %7832 = vmatpush1.msra.mxu0 0.0
  %7833 = vmatprep.subr.mxu0 0.0
  %7834 = vmatpush1.msra.mxu0 0.0
  %7835 = vmatprep.subr.mxu0 0.0
  %7836 = vmatpush1.msra.mxu0 0.0
  %7837 = vmatprep.subr.mxu0 0.0
  %7838 = vmatpush1.msra.mxu0 0.0
  %7839 = vmatprep.subr.mxu0 0.0
  %7840 = vmatpush1.msra.mxu0 0.0
  %7841 = vmatprep.subr.mxu0 0.0
  %7842 = vmatpush1.msra.mxu0 0.0
  %7843 = vmatprep.mubr.f32.mxu0 0.0
  %7844 = vmatmul.mubr.f32.gmra.mrb[0].mxu0 %v6423
  %v7845 = vpop.f32.mrb[0].mxu0
  %v7846 = vadd.f32 0.0, %v7845
  %v7847 = vpop.f32.mrb[0].mxu0
  %v7848 = vadd.f32 0.0, %v7847
  %7849 = vdwg.mxu0
  %v7850 = vadd.f32 %v6265, %v6568
  %v7851 = vadd.f32 %v6266, %v6570
  %v7852 = vadd.f32 %v6267, %v6639
  %v7853 = vadd.f32 %v6268, %v6641
  %v7854 = vadd.f32 %v6269, %v6710
  %v7855 = vadd.f32 %v6270, %v6712
  %v7856 = vadd.f32 %v6271, %v6781
  %v7857 = vadd.f32 %v6272, %v6783
  %v7858 = vadd.f32 %v6273, %v6852
  %v7859 = vadd.f32 %v6274, %v6854
  %v7860 = vadd.f32 %v6275, %v6923
  %v7861 = vadd.f32 %v6276, %v6925
  %v7862 = vadd.f32 %v6277, %v6994
  %v7863 = vadd.f32 %v6278, %v6996
  %v7864 = vadd.f32 %v6279, %v7065
  %v7865 = vadd.f32 %v6280, %v7067
  %v7866 = vadd.f32 %v6281, %v7136
  %v7867 = vadd.f32 %v6282, %v7138
  %v7868 = vadd.f32 %v6283, %v7207
  %v7869 = vadd.f32 %v6284, %v7209
  %v7870 = vadd.f32 %v6285, %v7278
  %v7871 = vadd.f32 %v6286, %v7280
  %v7872 = vadd.f32 %v6287, %v7349
  %v7873 = vadd.f32 %v6288, %v7351
  %v7874 = vadd.f32 %v6289, %v7420
  %v7875 = vadd.f32 %v6290, %v7422
  %v7876 = vadd.f32 %v6291, %v7491
  %v7877 = vadd.f32 %v6292, %v7493
  %v7878 = vadd.f32 %v6293, %v7562
  %v7879 = vadd.f32 %v6294, %v7564
  %v7880 = vadd.f32 %v6295, %v7633
  %v7881 = vadd.f32 %v6296, %v7635
  %v7882 = vadd.f32 %v6297, %v7704
  %v7883 = vadd.f32 %v6298, %v7706
  %v7884 = vadd.f32 %v6299, %v7775
  %v7885 = vadd.f32 %v6300, %v7777
  %v7886 = vadd.f32 %v6301, %v7846
  %v7887 = vadd.f32 %v6302, %v7848
  %s7888 = scalar_lea.vmem %s1, 40
  %v7889 = vld [vmem:[%s7888] sm:$0xff]
  %7890 = vrot.lane.b32.xlu0 %v14, 56
  %v7891 = vpop.permute.xlu0 %7890
  %7892 = vrot.lane.b32.xlu0 %v60, 56
  %v7893 = vpop.permute.xlu0 %7892
  %7894 = vrot.lane.b32.xlu0 %v15, 56
  %v7895 = vpop.permute.xlu0 %7894
  %7896 = vrot.lane.b32.xlu0 %v61, 56
  %v7897 = vpop.permute.xlu0 %7896
  %7898 = vrot.lane.b32.xlu0 %v16, 56
  %v7899 = vpop.permute.xlu0 %7898
  %7900 = vrot.lane.b32.xlu0 %v62, 56
  %v7901 = vpop.permute.xlu0 %7900
  %7902 = vrot.lane.b32.xlu0 %v17, 56
  %v7903 = vpop.permute.xlu0 %7902
  %7904 = vrot.lane.b32.xlu0 %v63, 56
  %v7905 = vpop.permute.xlu0 %7904
  %7906 = vrot.lane.b32.xlu0 %v18, 56
  %v7907 = vpop.permute.xlu0 %7906
  %7908 = vrot.lane.b32.xlu0 %v64, 56
  %v7909 = vpop.permute.xlu0 %7908
  %7910 = vrot.lane.b32.xlu0 %v19, 56
  %v7911 = vpop.permute.xlu0 %7910
  %7912 = vrot.lane.b32.xlu0 %v65, 56
  %v7913 = vpop.permute.xlu0 %7912
  %7914 = vrot.lane.b32.xlu0 %v20, 56
  %v7915 = vpop.permute.xlu0 %7914
  %7916 = vrot.lane.b32.xlu0 %v66, 56
  %v7917 = vpop.permute.xlu0 %7916
  %7918 = vrot.lane.b32.xlu0 %v21, 56
  %v7919 = vpop.permute.xlu0 %7918
  %7920 = vrot.lane.b32.xlu0 %v67, 56
  %v7921 = vpop.permute.xlu0 %7920
  %7922 = vrot.lane.b32.xlu0 %v22, 56
  %v7923 = vpop.permute.xlu0 %7922
  %7924 = vrot.lane.b32.xlu0 %v68, 56
  %v7925 = vpop.permute.xlu0 %7924
  %7926 = vrot.lane.b32.xlu0 %v23, 56
  %v7927 = vpop.permute.xlu0 %7926
  %7928 = vrot.lane.b32.xlu0 %v69, 56
  %v7929 = vpop.permute.xlu0 %7928
  %7930 = vrot.lane.b32.xlu0 %v24, 56
  %v7931 = vpop.permute.xlu0 %7930
  %7932 = vrot.lane.b32.xlu0 %v70, 56
  %v7933 = vpop.permute.xlu0 %7932
  %7934 = vrot.lane.b32.xlu0 %v25, 56
  %v7935 = vpop.permute.xlu0 %7934
  %7936 = vrot.lane.b32.xlu0 %v71, 56
  %v7937 = vpop.permute.xlu0 %7936
  %7938 = vrot.lane.b32.xlu0 %v26, 56
  %v7939 = vpop.permute.xlu0 %7938
  %7940 = vrot.lane.b32.xlu0 %v72, 56
  %v7941 = vpop.permute.xlu0 %7940
  %7942 = vrot.lane.b32.xlu0 %v27, 56
  %v7943 = vpop.permute.xlu0 %7942
  %7944 = vrot.lane.b32.xlu0 %v73, 56
  %v7945 = vpop.permute.xlu0 %7944
  %7946 = vrot.lane.b32.xlu0 %v28, 56
  %v7947 = vpop.permute.xlu0 %7946
  %7948 = vrot.lane.b32.xlu0 %v74, 56
  %v7949 = vpop.permute.xlu0 %7948
  %7950 = vrot.lane.b32.xlu0 %v29, 56
  %v7951 = vpop.permute.xlu0 %7950
  %7952 = vrot.lane.b32.xlu0 %v75, 56
  %v7953 = vpop.permute.xlu0 %7952
  %7954 = vrot.lane.b32.xlu0 %v30, 56
  %v7955 = vpop.permute.xlu0 %7954
  %7956 = vrot.lane.b32.xlu0 %v76, 56
  %v7957 = vpop.permute.xlu0 %7956
  %7958 = vrot.lane.b32.xlu0 %v31, 56
  %v7959 = vpop.permute.xlu0 %7958
  %7960 = vrot.lane.b32.xlu0 %v77, 56
  %v7961 = vpop.permute.xlu0 %7960
  %7962 = vrot.lane.b32.xlu0 %v32, 56
  %v7963 = vpop.permute.xlu0 %7962
  %7964 = vrot.lane.b32.xlu0 %v78, 56
  %v7965 = vpop.permute.xlu0 %7964
  %7966 = vrot.lane.b32.xlu0 %v33, 56
  %v7967 = vpop.permute.xlu0 %7966
  %vm7968 = vcmask 457728
  %v7969 = vsel %vm7968, %v7891, %v7893
  %v7970 = vsel %vm7968, %v7893, %v7895
  %v7971 = vsel %vm7968, %v7895, %v7897
  %v7972 = vsel %vm7968, %v7897, %v7899
  %v7973 = vsel %vm7968, %v7899, %v7901
  %v7974 = vsel %vm7968, %v7901, %v7903
  %v7975 = vsel %vm7968, %v7903, %v7905
  %v7976 = vsel %vm7968, %v7905, %v7907
  %v7977 = vsel %vm7968, %v7907, %v7909
  %v7978 = vsel %vm7968, %v7909, %v7911
  %v7979 = vsel %vm7968, %v7911, %v7913
  %v7980 = vsel %vm7968, %v7913, %v7915
  %v7981 = vsel %vm7968, %v7915, %v7917
  %v7982 = vsel %vm7968, %v7917, %v7919
  %v7983 = vsel %vm7968, %v7919, %v7921
  %v7984 = vsel %vm7968, %v7921, %v7923
  %v7985 = vsel %vm7968, %v7923, %v7925
  %v7986 = vsel %vm7968, %v7925, %v7927
  %v7987 = vsel %vm7968, %v7927, %v7929
  %v7988 = vsel %vm7968, %v7929, %v7931
  %v7989 = vsel %vm7968, %v7931, %v7933
  %v7990 = vsel %vm7968, %v7933, %v7935
  %v7991 = vsel %vm7968, %v7935, %v7937
  %v7992 = vsel %vm7968, %v7937, %v7939
  %v7993 = vsel %vm7968, %v7939, %v7941
  %v7994 = vsel %vm7968, %v7941, %v7943
  %v7995 = vsel %vm7968, %v7943, %v7945
  %v7996 = vsel %vm7968, %v7945, %v7947
  %v7997 = vsel %vm7968, %v7947, %v7949
  %v7998 = vsel %vm7968, %v7949, %v7951
  %v7999 = vsel %vm7968, %v7951, %v7953
  %v8000 = vsel %vm7968, %v7953, %v7955
  %v8001 = vsel %vm7968, %v7955, %v7957
  %v8002 = vsel %vm7968, %v7957, %v7959
  %v8003 = vsel %vm7968, %v7959, %v7961
  %v8004 = vsel %vm7968, %v7961, %v7963
  %v8005 = vsel %vm7968, %v7963, %v7965
  %v8006 = vsel %vm7968, %v7965, %v7967
  %v8008 = vsel %vm79, %v7889, 0
  %v8010 = vsel %vm83, %v7969, 0
  %v8012 = vsel %vm83, %v7970, 0
  %v8014 = vsel %vm83, %v7971, 0
  %v8016 = vsel %vm83, %v7972, 0
  %v8018 = vsel %vm83, %v7973, 0
  %v8020 = vsel %vm83, %v7974, 0
  %v8022 = vsel %vm83, %v7975, 0
  %v8024 = vsel %vm83, %v7976, 0
  %v8026 = vsel %vm83, %v7977, 0
  %v8028 = vsel %vm83, %v7978, 0
  %v8030 = vsel %vm83, %v7979, 0
  %v8032 = vsel %vm83, %v7980, 0
  %v8034 = vsel %vm83, %v7981, 0
  %v8036 = vsel %vm83, %v7982, 0
  %v8038 = vsel %vm83, %v7983, 0
  %v8040 = vsel %vm83, %v7984, 0
  %v8042 = vsel %vm83, %v7985, 0
  %v8044 = vsel %vm83, %v7986, 0
  %v8046 = vsel %vm83, %v7987, 0
  %v8048 = vsel %vm83, %v7988, 0
  %v8050 = vsel %vm83, %v7989, 0
  %v8052 = vsel %vm83, %v7990, 0
  %v8054 = vsel %vm83, %v7991, 0
  %v8056 = vsel %vm83, %v7992, 0
  %v8058 = vsel %vm83, %v7993, 0
  %v8060 = vsel %vm83, %v7994, 0
  %v8062 = vsel %vm83, %v7995, 0
  %v8064 = vsel %vm83, %v7996, 0
  %v8066 = vsel %vm83, %v7997, 0
  %v8068 = vsel %vm83, %v7998, 0
  %v8070 = vsel %vm83, %v7999, 0
  %v8072 = vsel %vm83, %v8000, 0
  %v8074 = vsel %vm83, %v8001, 0
  %v8076 = vsel %vm83, %v8002, 0
  %v8078 = vsel %vm83, %v8003, 0
  %v8080 = vsel %vm83, %v8004, 0
  %v8082 = vsel %vm83, %v8005, 0
  %v8084 = vsel %vm83, %v8006, 0
  %8086 = vmatprep.subr.mxu0 %v8012
  %8087 = vmatpush1.msra.mxu0 %v8010
  %8088 = vmatprep.subr.mxu0 0.0
  %8089 = vmatpush1.msra.mxu0 0.0
  %8090 = vmatprep.subr.mxu0 0.0
  %8091 = vmatpush1.msra.mxu0 0.0
  %8092 = vmatprep.subr.mxu0 0.0
  %8093 = vmatpush1.msra.mxu0 0.0
  %8094 = vmatprep.subr.mxu0 0.0
  %8095 = vmatpush1.msra.mxu0 0.0
  %8096 = vmatprep.subr.mxu0 0.0
  %8097 = vmatpush1.msra.mxu0 0.0
  %8098 = vmatprep.subr.mxu0 0.0
  %8099 = vmatpush1.msra.mxu0 0.0
  %8100 = vmatprep.subr.mxu0 0.0
  %8101 = vmatpush1.msra.mxu0 0.0
  %8102 = vmatprep.subr.mxu0 0.0
  %8103 = vmatpush1.msra.mxu0 0.0
  %8104 = vmatprep.subr.mxu0 0.0
  %8105 = vmatpush1.msra.mxu0 0.0
  %8106 = vmatprep.subr.mxu0 0.0
  %8107 = vmatpush1.msra.mxu0 0.0
  %8108 = vmatprep.subr.mxu0 0.0
  %8109 = vmatpush1.msra.mxu0 0.0
  %8110 = vmatprep.subr.mxu0 0.0
  %8111 = vmatpush1.msra.mxu0 0.0
  %8112 = vmatprep.subr.mxu0 0.0
  %8113 = vmatpush1.msra.mxu0 0.0
  %8114 = vmatprep.subr.mxu0 0.0
  %8115 = vmatpush1.msra.mxu0 0.0
  %8116 = vmatprep.subr.mxu0 0.0
  %8117 = vmatpush1.msra.mxu0 0.0
  %8118 = vmatprep.subr.mxu0 0.0
  %8119 = vmatpush1.msra.mxu0 0.0
  %8120 = vmatprep.subr.mxu0 0.0
  %8121 = vmatpush1.msra.mxu0 0.0
  %8122 = vmatprep.subr.mxu0 0.0
  %8123 = vmatpush1.msra.mxu0 0.0
  %8124 = vmatprep.subr.mxu0 0.0
  %8125 = vmatpush1.msra.mxu0 0.0
  %8126 = vmatprep.subr.mxu0 0.0
  %8127 = vmatpush1.msra.mxu0 0.0
  %8128 = vmatprep.subr.mxu0 0.0
  %8129 = vmatpush1.msra.mxu0 0.0
  %8130 = vmatprep.subr.mxu0 0.0
  %8131 = vmatpush1.msra.mxu0 0.0
  %8132 = vmatprep.subr.mxu0 0.0
  %8133 = vmatpush1.msra.mxu0 0.0
  %8134 = vmatprep.subr.mxu0 0.0
  %8135 = vmatpush1.msra.mxu0 0.0
  %8136 = vmatprep.subr.mxu0 0.0
  %8137 = vmatpush1.msra.mxu0 0.0
  %8138 = vmatprep.subr.mxu0 0.0
  %8139 = vmatpush1.msra.mxu0 0.0
  %8140 = vmatprep.subr.mxu0 0.0
  %8141 = vmatpush1.msra.mxu0 0.0
  %8142 = vmatprep.subr.mxu0 0.0
  %8143 = vmatpush1.msra.mxu0 0.0
  %8144 = vmatprep.subr.mxu0 0.0
  %8145 = vmatpush1.msra.mxu0 0.0
  %8146 = vmatprep.subr.mxu0 0.0
  %8147 = vmatpush1.msra.mxu0 0.0
  %8148 = vmatprep.subr.mxu0 0.0
  %8149 = vmatpush1.msra.mxu0 0.0
  %8150 = vmatprep.mubr.f32.mxu0 0.0
  %8151 = vmatmul.mubr.f32.gmra.mrb[0].mxu0 %v8008
  %v8152 = vpop.f32.mrb[0].mxu0
  %v8153 = vadd.f32 0.0, %v8152
  %v8154 = vpop.f32.mrb[0].mxu0
  %v8155 = vadd.f32 0.0, %v8154
  %8156 = vdwg.mxu0
  %8157 = vmatprep.subr.mxu0 %v8016
  %8158 = vmatpush1.msra.mxu0 %v8014
  %8159 = vmatprep.subr.mxu0 0.0
  %8160 = vmatpush1.msra.mxu0 0.0
  %8161 = vmatprep.subr.mxu0 0.0
  %8162 = vmatpush1.msra.mxu0 0.0
  %8163 = vmatprep.subr.mxu0 0.0
  %8164 = vmatpush1.msra.mxu0 0.0
  %8165 = vmatprep.subr.mxu0 0.0
  %8166 = vmatpush1.msra.mxu0 0.0
  %8167 = vmatprep.subr.mxu0 0.0
  %8168 = vmatpush1.msra.mxu0 0.0
  %8169 = vmatprep.subr.mxu0 0.0
  %8170 = vmatpush1.msra.mxu0 0.0
  %8171 = vmatprep.subr.mxu0 0.0
  %8172 = vmatpush1.msra.mxu0 0.0
  %8173 = vmatprep.subr.mxu0 0.0
  %8174 = vmatpush1.msra.mxu0 0.0
  %8175 = vmatprep.subr.mxu0 0.0
  %8176 = vmatpush1.msra.mxu0 0.0
  %8177 = vmatprep.subr.mxu0 0.0
  %8178 = vmatpush1.msra.mxu0 0.0
  %8179 = vmatprep.subr.mxu0 0.0
  %8180 = vmatpush1.msra.mxu0 0.0
  %8181 = vmatprep.subr.mxu0 0.0
  %8182 = vmatpush1.msra.mxu0 0.0
  %8183 = vmatprep.subr.mxu0 0.0
  %8184 = vmatpush1.msra.mxu0 0.0
  %8185 = vmatprep.subr.mxu0 0.0
  %8186 = vmatpush1.msra.mxu0 0.0
  %8187 = vmatprep.subr.mxu0 0.0
  %8188 = vmatpush1.msra.mxu0 0.0
  %8189 = vmatprep.subr.mxu0 0.0
  %8190 = vmatpush1.msra.mxu0 0.0
  %8191 = vmatprep.subr.mxu0 0.0
  %8192 = vmatpush1.msra.mxu0 0.0
  %8193 = vmatprep.subr.mxu0 0.0
  %8194 = vmatpush1.msra.mxu0 0.0
  %8195 = vmatprep.subr.mxu0 0.0
  %8196 = vmatpush1.msra.mxu0 0.0
  %8197 = vmatprep.subr.mxu0 0.0
  %8198 = vmatpush1.msra.mxu0 0.0
  %8199 = vmatprep.subr.mxu0 0.0
  %8200 = vmatpush1.msra.mxu0 0.0
  %8201 = vmatprep.subr.mxu0 0.0
  %8202 = vmatpush1.msra.mxu0 0.0
  %8203 = vmatprep.subr.mxu0 0.0
  %8204 = vmatpush1.msra.mxu0 0.0
  %8205 = vmatprep.subr.mxu0 0.0
  %8206 = vmatpush1.msra.mxu0 0.0
  %8207 = vmatprep.subr.mxu0 0.0
  %8208 = vmatpush1.msra.mxu0 0.0
  %8209 = vmatprep.subr.mxu0 0.0
  %8210 = vmatpush1.msra.mxu0 0.0
  %8211 = vmatprep.subr.mxu0 0.0
  %8212 = vmatpush1.msra.mxu0 0.0
  %8213 = vmatprep.subr.mxu0 0.0
  %8214 = vmatpush1.msra.mxu0 0.0
  %8215 = vmatprep.subr.mxu0 0.0
  %8216 = vmatpush1.msra.mxu0 0.0
  %8217 = vmatprep.subr.mxu0 0.0
  %8218 = vmatpush1.msra.mxu0 0.0
  %8219 = vmatprep.subr.mxu0 0.0
  %8220 = vmatpush1.msra.mxu0 0.0
  %8221 = vmatprep.mubr.f32.mxu0 0.0
  %8222 = vmatmul.mubr.f32.gmra.mrb[0].mxu0 %v8008
  %v8223 = vpop.f32.mrb[0].mxu0
  %v8224 = vadd.f32 0.0, %v8223
  %v8225 = vpop.f32.mrb[0].mxu0
  %v8226 = vadd.f32 0.0, %v8225
  %8227 = vdwg.mxu0
  %8228 = vmatprep.subr.mxu0 %v8020
  %8229 = vmatpush1.msra.mxu0 %v8018
  %8230 = vmatprep.subr.mxu0 0.0
  %8231 = vmatpush1.msra.mxu0 0.0
  %8232 = vmatprep.subr.mxu0 0.0
  %8233 = vmatpush1.msra.mxu0 0.0
  %8234 = vmatprep.subr.mxu0 0.0
  %8235 = vmatpush1.msra.mxu0 0.0
  %8236 = vmatprep.subr.mxu0 0.0
  %8237 = vmatpush1.msra.mxu0 0.0
  %8238 = vmatprep.subr.mxu0 0.0
  %8239 = vmatpush1.msra.mxu0 0.0
  %8240 = vmatprep.subr.mxu0 0.0
  %8241 = vmatpush1.msra.mxu0 0.0
  %8242 = vmatprep.subr.mxu0 0.0
  %8243 = vmatpush1.msra.mxu0 0.0
  %8244 = vmatprep.subr.mxu0 0.0
  %8245 = vmatpush1.msra.mxu0 0.0
  %8246 = vmatprep.subr.mxu0 0.0
  %8247 = vmatpush1.msra.mxu0 0.0
  %8248 = vmatprep.subr.mxu0 0.0
  %8249 = vmatpush1.msra.mxu0 0.0
  %8250 = vmatprep.subr.mxu0 0.0
  %8251 = vmatpush1.msra.mxu0 0.0
  %8252 = vmatprep.subr.mxu0 0.0
  %8253 = vmatpush1.msra.mxu0 0.0
  %8254 = vmatprep.subr.mxu0 0.0
  %8255 = vmatpush1.msra.mxu0 0.0
  %8256 = vmatprep.subr.mxu0 0.0
  %8257 = vmatpush1.msra.mxu0 0.0
  %8258 = vmatprep.subr.mxu0 0.0
  %8259 = vmatpush1.msra.mxu0 0.0
  %8260 = vmatprep.subr.mxu0 0.0
  %8261 = vmatpush1.msra.mxu0 0.0
  %8262 = vmatprep.subr.mxu0 0.0
  %8263 = vmatpush1.msra.mxu0 0.0
  %8264 = vmatprep.subr.mxu0 0.0
  %8265 = vmatpush1.msra.mxu0 0.0
  %8266 = vmatprep.subr.mxu0 0.0
  %8267 = vmatpush1.msra.mxu0 0.0
  %8268 = vmatprep.subr.mxu0 0.0
  %8269 = vmatpush1.msra.mxu0 0.0
  %8270 = vmatprep.subr.mxu0 0.0
  %8271 = vmatpush1.msra.mxu0 0.0
  %8272 = vmatprep.subr.mxu0 0.0
  %8273 = vmatpush1.msra.mxu0 0.0
  %8274 = vmatprep.subr.mxu0 0.0
  %8275 = vmatpush1.msra.mxu0 0.0
  %8276 = vmatprep.subr.mxu0 0.0
  %8277 = vmatpush1.msra.mxu0 0.0
  %8278 = vmatprep.subr.mxu0 0.0
  %8279 = vmatpush1.msra.mxu0 0.0
  %8280 = vmatprep.subr.mxu0 0.0
  %8281 = vmatpush1.msra.mxu0 0.0
  %8282 = vmatprep.subr.mxu0 0.0
  %8283 = vmatpush1.msra.mxu0 0.0
  %8284 = vmatprep.subr.mxu0 0.0
  %8285 = vmatpush1.msra.mxu0 0.0
  %8286 = vmatprep.subr.mxu0 0.0
  %8287 = vmatpush1.msra.mxu0 0.0
  %8288 = vmatprep.subr.mxu0 0.0
  %8289 = vmatpush1.msra.mxu0 0.0
  %8290 = vmatprep.subr.mxu0 0.0
  %8291 = vmatpush1.msra.mxu0 0.0
  %8292 = vmatprep.mubr.f32.mxu0 0.0
  %8293 = vmatmul.mubr.f32.gmra.mrb[0].mxu0 %v8008
  %v8294 = vpop.f32.mrb[0].mxu0
  %v8295 = vadd.f32 0.0, %v8294
  %v8296 = vpop.f32.mrb[0].mxu0
  %v8297 = vadd.f32 0.0, %v8296
  %8298 = vdwg.mxu0
  %8299 = vmatprep.subr.mxu0 %v8024
  %8300 = vmatpush1.msra.mxu0 %v8022
  %8301 = vmatprep.subr.mxu0 0.0
  %8302 = vmatpush1.msra.mxu0 0.0
  %8303 = vmatprep.subr.mxu0 0.0
  %8304 = vmatpush1.msra.mxu0 0.0
  %8305 = vmatprep.subr.mxu0 0.0
  %8306 = vmatpush1.msra.mxu0 0.0
  %8307 = vmatprep.subr.mxu0 0.0
  %8308 = vmatpush1.msra.mxu0 0.0
  %8309 = vmatprep.subr.mxu0 0.0
  %8310 = vmatpush1.msra.mxu0 0.0
  %8311 = vmatprep.subr.mxu0 0.0
  %8312 = vmatpush1.msra.mxu0 0.0
  %8313 = vmatprep.subr.mxu0 0.0
  %8314 = vmatpush1.msra.mxu0 0.0
  %8315 = vmatprep.subr.mxu0 0.0
  %8316 = vmatpush1.msra.mxu0 0.0
  %8317 = vmatprep.subr.mxu0 0.0
  %8318 = vmatpush1.msra.mxu0 0.0
  %8319 = vmatprep.subr.mxu0 0.0
  %8320 = vmatpush1.msra.mxu0 0.0
  %8321 = vmatprep.subr.mxu0 0.0
  %8322 = vmatpush1.msra.mxu0 0.0
  %8323 = vmatprep.subr.mxu0 0.0
  %8324 = vmatpush1.msra.mxu0 0.0
  %8325 = vmatprep.subr.mxu0 0.0
  %8326 = vmatpush1.msra.mxu0 0.0
  %8327 = vmatprep.subr.mxu0 0.0
  %8328 = vmatpush1.msra.mxu0 0.0
  %8329 = vmatprep.subr.mxu0 0.0
  %8330 = vmatpush1.msra.mxu0 0.0
  %8331 = vmatprep.subr.mxu0 0.0
  %8332 = vmatpush1.msra.mxu0 0.0
  %8333 = vmatprep.subr.mxu0 0.0
  %8334 = vmatpush1.msra.mxu0 0.0
  %8335 = vmatprep.subr.mxu0 0.0
  %8336 = vmatpush1.msra.mxu0 0.0
  %8337 = vmatprep.subr.mxu0 0.0
  %8338 = vmatpush1.msra.mxu0 0.0
  %8339 = vmatprep.subr.mxu0 0.0
  %8340 = vmatpush1.msra.mxu0 0.0
  %8341 = vmatprep.subr.mxu0 0.0
  %8342 = vmatpush1.msra.mxu0 0.0
  %8343 = vmatprep.subr.mxu0 0.0
  %8344 = vmatpush1.msra.mxu0 0.0
  %8345 = vmatprep.subr.mxu0 0.0
  %8346 = vmatpush1.msra.mxu0 0.0
  %8347 = vmatprep.subr.mxu0 0.0
  %8348 = vmatpush1.msra.mxu0 0.0
  %8349 = vmatprep.subr.mxu0 0.0
  %8350 = vmatpush1.msra.mxu0 0.0
  %8351 = vmatprep.subr.mxu0 0.0
  %8352 = vmatpush1.msra.mxu0 0.0
  %8353 = vmatprep.subr.mxu0 0.0
  %8354 = vmatpush1.msra.mxu0 0.0
  %8355 = vmatprep.subr.mxu0 0.0
  %8356 = vmatpush1.msra.mxu0 0.0
  %8357 = vmatprep.subr.mxu0 0.0
  %8358 = vmatpush1.msra.mxu0 0.0
  %8359 = vmatprep.subr.mxu0 0.0
  %8360 = vmatpush1.msra.mxu0 0.0
  %8361 = vmatprep.subr.mxu0 0.0
  %8362 = vmatpush1.msra.mxu0 0.0
  %8363 = vmatprep.mubr.f32.mxu0 0.0
  %8364 = vmatmul.mubr.f32.gmra.mrb[0].mxu0 %v8008
  %v8365 = vpop.f32.mrb[0].mxu0
  %v8366 = vadd.f32 0.0, %v8365
  %v8367 = vpop.f32.mrb[0].mxu0
  %v8368 = vadd.f32 0.0, %v8367
  %8369 = vdwg.mxu0
  %8370 = vmatprep.subr.mxu0 %v8028
  %8371 = vmatpush1.msra.mxu0 %v8026
  %8372 = vmatprep.subr.mxu0 0.0
  %8373 = vmatpush1.msra.mxu0 0.0
  %8374 = vmatprep.subr.mxu0 0.0
  %8375 = vmatpush1.msra.mxu0 0.0
  %8376 = vmatprep.subr.mxu0 0.0
  %8377 = vmatpush1.msra.mxu0 0.0
  %8378 = vmatprep.subr.mxu0 0.0
  %8379 = vmatpush1.msra.mxu0 0.0
  %8380 = vmatprep.subr.mxu0 0.0
  %8381 = vmatpush1.msra.mxu0 0.0
  %8382 = vmatprep.subr.mxu0 0.0
  %8383 = vmatpush1.msra.mxu0 0.0
  %8384 = vmatprep.subr.mxu0 0.0
  %8385 = vmatpush1.msra.mxu0 0.0
  %8386 = vmatprep.subr.mxu0 0.0
  %8387 = vmatpush1.msra.mxu0 0.0
  %8388 = vmatprep.subr.mxu0 0.0
  %8389 = vmatpush1.msra.mxu0 0.0
  %8390 = vmatprep.subr.mxu0 0.0
  %8391 = vmatpush1.msra.mxu0 0.0
  %8392 = vmatprep.subr.mxu0 0.0
  %8393 = vmatpush1.msra.mxu0 0.0
  %8394 = vmatprep.subr.mxu0 0.0
  %8395 = vmatpush1.msra.mxu0 0.0
  %8396 = vmatprep.subr.mxu0 0.0
  %8397 = vmatpush1.msra.mxu0 0.0
  %8398 = vmatprep.subr.mxu0 0.0
  %8399 = vmatpush1.msra.mxu0 0.0
  %8400 = vmatprep.subr.mxu0 0.0
  %8401 = vmatpush1.msra.mxu0 0.0
  %8402 = vmatprep.subr.mxu0 0.0
  %8403 = vmatpush1.msra.mxu0 0.0
  %8404 = vmatprep.subr.mxu0 0.0
  %8405 = vmatpush1.msra.mxu0 0.0
  %8406 = vmatprep.subr.mxu0 0.0
  %8407 = vmatpush1.msra.mxu0 0.0
  %8408 = vmatprep.subr.mxu0 0.0
  %8409 = vmatpush1.msra.mxu0 0.0
  %8410 = vmatprep.subr.mxu0 0.0
  %8411 = vmatpush1.msra.mxu0 0.0
  %8412 = vmatprep.subr.mxu0 0.0
  %8413 = vmatpush1.msra.mxu0 0.0
  %8414 = vmatprep.subr.mxu0 0.0
  %8415 = vmatpush1.msra.mxu0 0.0
  %8416 = vmatprep.subr.mxu0 0.0
  %8417 = vmatpush1.msra.mxu0 0.0
  %8418 = vmatprep.subr.mxu0 0.0
  %8419 = vmatpush1.msra.mxu0 0.0
  %8420 = vmatprep.subr.mxu0 0.0
  %8421 = vmatpush1.msra.mxu0 0.0
  %8422 = vmatprep.subr.mxu0 0.0
  %8423 = vmatpush1.msra.mxu0 0.0
  %8424 = vmatprep.subr.mxu0 0.0
  %8425 = vmatpush1.msra.mxu0 0.0
  %8426 = vmatprep.subr.mxu0 0.0
  %8427 = vmatpush1.msra.mxu0 0.0
  %8428 = vmatprep.subr.mxu0 0.0
  %8429 = vmatpush1.msra.mxu0 0.0
  %8430 = vmatprep.subr.mxu0 0.0
  %8431 = vmatpush1.msra.mxu0 0.0
  %8432 = vmatprep.subr.mxu0 0.0
  %8433 = vmatpush1.msra.mxu0 0.0
  %8434 = vmatprep.mubr.f32.mxu0 0.0
  %8435 = vmatmul.mubr.f32.gmra.mrb[0].mxu0 %v8008
  %v8436 = vpop.f32.mrb[0].mxu0
  %v8437 = vadd.f32 0.0, %v8436
  %v8438 = vpop.f32.mrb[0].mxu0
  %v8439 = vadd.f32 0.0, %v8438
  %8440 = vdwg.mxu0
  %8441 = vmatprep.subr.mxu0 %v8032
  %8442 = vmatpush1.msra.mxu0 %v8030
  %8443 = vmatprep.subr.mxu0 0.0
  %8444 = vmatpush1.msra.mxu0 0.0
  %8445 = vmatprep.subr.mxu0 0.0
  %8446 = vmatpush1.msra.mxu0 0.0
  %8447 = vmatprep.subr.mxu0 0.0
  %8448 = vmatpush1.msra.mxu0 0.0
  %8449 = vmatprep.subr.mxu0 0.0
  %8450 = vmatpush1.msra.mxu0 0.0
  %8451 = vmatprep.subr.mxu0 0.0
  %8452 = vmatpush1.msra.mxu0 0.0
  %8453 = vmatprep.subr.mxu0 0.0
  %8454 = vmatpush1.msra.mxu0 0.0
  %8455 = vmatprep.subr.mxu0 0.0
  %8456 = vmatpush1.msra.mxu0 0.0
  %8457 = vmatprep.subr.mxu0 0.0
  %8458 = vmatpush1.msra.mxu0 0.0
  %8459 = vmatprep.subr.mxu0 0.0
  %8460 = vmatpush1.msra.mxu0 0.0
  %8461 = vmatprep.subr.mxu0 0.0
  %8462 = vmatpush1.msra.mxu0 0.0
  %8463 = vmatprep.subr.mxu0 0.0
  %8464 = vmatpush1.msra.mxu0 0.0
  %8465 = vmatprep.subr.mxu0 0.0
  %8466 = vmatpush1.msra.mxu0 0.0
  %8467 = vmatprep.subr.mxu0 0.0
  %8468 = vmatpush1.msra.mxu0 0.0
  %8469 = vmatprep.subr.mxu0 0.0
  %8470 = vmatpush1.msra.mxu0 0.0
  %8471 = vmatprep.subr.mxu0 0.0
  %8472 = vmatpush1.msra.mxu0 0.0
  %8473 = vmatprep.subr.mxu0 0.0
  %8474 = vmatpush1.msra.mxu0 0.0
  %8475 = vmatprep.subr.mxu0 0.0
  %8476 = vmatpush1.msra.mxu0 0.0
  %8477 = vmatprep.subr.mxu0 0.0
  %8478 = vmatpush1.msra.mxu0 0.0
  %8479 = vmatprep.subr.mxu0 0.0
  %8480 = vmatpush1.msra.mxu0 0.0
  %8481 = vmatprep.subr.mxu0 0.0
  %8482 = vmatpush1.msra.mxu0 0.0
  %8483 = vmatprep.subr.mxu0 0.0
  %8484 = vmatpush1.msra.mxu0 0.0
  %8485 = vmatprep.subr.mxu0 0.0
  %8486 = vmatpush1.msra.mxu0 0.0
  %8487 = vmatprep.subr.mxu0 0.0
  %8488 = vmatpush1.msra.mxu0 0.0
  %8489 = vmatprep.subr.mxu0 0.0
  %8490 = vmatpush1.msra.mxu0 0.0
  %8491 = vmatprep.subr.mxu0 0.0
  %8492 = vmatpush1.msra.mxu0 0.0
  %8493 = vmatprep.subr.mxu0 0.0
  %8494 = vmatpush1.msra.mxu0 0.0
  %8495 = vmatprep.subr.mxu0 0.0
  %8496 = vmatpush1.msra.mxu0 0.0
  %8497 = vmatprep.subr.mxu0 0.0
  %8498 = vmatpush1.msra.mxu0 0.0
  %8499 = vmatprep.subr.mxu0 0.0
  %8500 = vmatpush1.msra.mxu0 0.0
  %8501 = vmatprep.subr.mxu0 0.0
  %8502 = vmatpush1.msra.mxu0 0.0
  %8503 = vmatprep.subr.mxu0 0.0
  %8504 = vmatpush1.msra.mxu0 0.0
  %8505 = vmatprep.mubr.f32.mxu0 0.0
  %8506 = vmatmul.mubr.f32.gmra.mrb[0].mxu0 %v8008
  %v8507 = vpop.f32.mrb[0].mxu0
  %v8508 = vadd.f32 0.0, %v8507
  %v8509 = vpop.f32.mrb[0].mxu0
  %v8510 = vadd.f32 0.0, %v8509
  %8511 = vdwg.mxu0
  %8512 = vmatprep.subr.mxu0 %v8036
  %8513 = vmatpush1.msra.mxu0 %v8034
  %8514 = vmatprep.subr.mxu0 0.0
  %8515 = vmatpush1.msra.mxu0 0.0
  %8516 = vmatprep.subr.mxu0 0.0
  %8517 = vmatpush1.msra.mxu0 0.0
  %8518 = vmatprep.subr.mxu0 0.0
  %8519 = vmatpush1.msra.mxu0 0.0
  %8520 = vmatprep.subr.mxu0 0.0
  %8521 = vmatpush1.msra.mxu0 0.0
  %8522 = vmatprep.subr.mxu0 0.0
  %8523 = vmatpush1.msra.mxu0 0.0
  %8524 = vmatprep.subr.mxu0 0.0
  %8525 = vmatpush1.msra.mxu0 0.0
  %8526 = vmatprep.subr.mxu0 0.0
  %8527 = vmatpush1.msra.mxu0 0.0
  %8528 = vmatprep.subr.mxu0 0.0
  %8529 = vmatpush1.msra.mxu0 0.0
  %8530 = vmatprep.subr.mxu0 0.0
  %8531 = vmatpush1.msra.mxu0 0.0
  %8532 = vmatprep.subr.mxu0 0.0
  %8533 = vmatpush1.msra.mxu0 0.0
  %8534 = vmatprep.subr.mxu0 0.0
  %8535 = vmatpush1.msra.mxu0 0.0
  %8536 = vmatprep.subr.mxu0 0.0
  %8537 = vmatpush1.msra.mxu0 0.0
  %8538 = vmatprep.subr.mxu0 0.0
  %8539 = vmatpush1.msra.mxu0 0.0
  %8540 = vmatprep.subr.mxu0 0.0
  %8541 = vmatpush1.msra.mxu0 0.0
  %8542 = vmatprep.subr.mxu0 0.0
  %8543 = vmatpush1.msra.mxu0 0.0
  %8544 = vmatprep.subr.mxu0 0.0
  %8545 = vmatpush1.msra.mxu0 0.0
  %8546 = vmatprep.subr.mxu0 0.0
  %8547 = vmatpush1.msra.mxu0 0.0
  %8548 = vmatprep.subr.mxu0 0.0
  %8549 = vmatpush1.msra.mxu0 0.0
  %8550 = vmatprep.subr.mxu0 0.0
  %8551 = vmatpush1.msra.mxu0 0.0
  %8552 = vmatprep.subr.mxu0 0.0
  %8553 = vmatpush1.msra.mxu0 0.0
  %8554 = vmatprep.subr.mxu0 0.0
  %8555 = vmatpush1.msra.mxu0 0.0
  %8556 = vmatprep.subr.mxu0 0.0
  %8557 = vmatpush1.msra.mxu0 0.0
  %8558 = vmatprep.subr.mxu0 0.0
  %8559 = vmatpush1.msra.mxu0 0.0
  %8560 = vmatprep.subr.mxu0 0.0
  %8561 = vmatpush1.msra.mxu0 0.0
  %8562 = vmatprep.subr.mxu0 0.0
  %8563 = vmatpush1.msra.mxu0 0.0
  %8564 = vmatprep.subr.mxu0 0.0
  %8565 = vmatpush1.msra.mxu0 0.0
  %8566 = vmatprep.subr.mxu0 0.0
  %8567 = vmatpush1.msra.mxu0 0.0
  %8568 = vmatprep.subr.mxu0 0.0
  %8569 = vmatpush1.msra.mxu0 0.0
  %8570 = vmatprep.subr.mxu0 0.0
  %8571 = vmatpush1.msra.mxu0 0.0
  %8572 = vmatprep.subr.mxu0 0.0
  %8573 = vmatpush1.msra.mxu0 0.0
  %8574 = vmatprep.subr.mxu0 0.0
  %8575 = vmatpush1.msra.mxu0 0.0
  %8576 = vmatprep.mubr.f32.mxu0 0.0
  %8577 = vmatmul.mubr.f32.gmra.mrb[0].mxu0 %v8008
  %v8578 = vpop.f32.mrb[0].mxu0
  %v8579 = vadd.f32 0.0, %v8578
  %v8580 = vpop.f32.mrb[0].mxu0
  %v8581 = vadd.f32 0.0, %v8580
  %8582 = vdwg.mxu0
  %8583 = vmatprep.subr.mxu0 %v8040
  %8584 = vmatpush1.msra.mxu0 %v8038
  %8585 = vmatprep.subr.mxu0 0.0
  %8586 = vmatpush1.msra.mxu0 0.0
  %8587 = vmatprep.subr.mxu0 0.0
  %8588 = vmatpush1.msra.mxu0 0.0
  %8589 = vmatprep.subr.mxu0 0.0
  %8590 = vmatpush1.msra.mxu0 0.0
  %8591 = vmatprep.subr.mxu0 0.0
  %8592 = vmatpush1.msra.mxu0 0.0
  %8593 = vmatprep.subr.mxu0 0.0
  %8594 = vmatpush1.msra.mxu0 0.0
  %8595 = vmatprep.subr.mxu0 0.0
  %8596 = vmatpush1.msra.mxu0 0.0
  %8597 = vmatprep.subr.mxu0 0.0
  %8598 = vmatpush1.msra.mxu0 0.0
  %8599 = vmatprep.subr.mxu0 0.0
  %8600 = vmatpush1.msra.mxu0 0.0
  %8601 = vmatprep.subr.mxu0 0.0
  %8602 = vmatpush1.msra.mxu0 0.0
  %8603 = vmatprep.subr.mxu0 0.0
  %8604 = vmatpush1.msra.mxu0 0.0
  %8605 = vmatprep.subr.mxu0 0.0
  %8606 = vmatpush1.msra.mxu0 0.0
  %8607 = vmatprep.subr.mxu0 0.0
  %8608 = vmatpush1.msra.mxu0 0.0
  %8609 = vmatprep.subr.mxu0 0.0
  %8610 = vmatpush1.msra.mxu0 0.0
  %8611 = vmatprep.subr.mxu0 0.0
  %8612 = vmatpush1.msra.mxu0 0.0
  %8613 = vmatprep.subr.mxu0 0.0
  %8614 = vmatpush1.msra.mxu0 0.0
  %8615 = vmatprep.subr.mxu0 0.0
  %8616 = vmatpush1.msra.mxu0 0.0
  %8617 = vmatprep.subr.mxu0 0.0
  %8618 = vmatpush1.msra.mxu0 0.0
  %8619 = vmatprep.subr.mxu0 0.0
  %8620 = vmatpush1.msra.mxu0 0.0
  %8621 = vmatprep.subr.mxu0 0.0
  %8622 = vmatpush1.msra.mxu0 0.0
  %8623 = vmatprep.subr.mxu0 0.0
  %8624 = vmatpush1.msra.mxu0 0.0
  %8625 = vmatprep.subr.mxu0 0.0
  %8626 = vmatpush1.msra.mxu0 0.0
  %8627 = vmatprep.subr.mxu0 0.0
  %8628 = vmatpush1.msra.mxu0 0.0
  %8629 = vmatprep.subr.mxu0 0.0
  %8630 = vmatpush1.msra.mxu0 0.0
  %8631 = vmatprep.subr.mxu0 0.0
  %8632 = vmatpush1.msra.mxu0 0.0
  %8633 = vmatprep.subr.mxu0 0.0
  %8634 = vmatpush1.msra.mxu0 0.0
  %8635 = vmatprep.subr.mxu0 0.0
  %8636 = vmatpush1.msra.mxu0 0.0
  %8637 = vmatprep.subr.mxu0 0.0
  %8638 = vmatpush1.msra.mxu0 0.0
  %8639 = vmatprep.subr.mxu0 0.0
  %8640 = vmatpush1.msra.mxu0 0.0
  %8641 = vmatprep.subr.mxu0 0.0
  %8642 = vmatpush1.msra.mxu0 0.0
  %8643 = vmatprep.subr.mxu0 0.0
  %8644 = vmatpush1.msra.mxu0 0.0
  %8645 = vmatprep.subr.mxu0 0.0
  %8646 = vmatpush1.msra.mxu0 0.0
  %8647 = vmatprep.mubr.f32.mxu0 0.0
  %8648 = vmatmul.mubr.f32.gmra.mrb[0].mxu0 %v8008
  %v8649 = vpop.f32.mrb[0].mxu0
  %v8650 = vadd.f32 0.0, %v8649
  %v8651 = vpop.f32.mrb[0].mxu0
  %v8652 = vadd.f32 0.0, %v8651
  %8653 = vdwg.mxu0
  %8654 = vmatprep.subr.mxu0 %v8044
  %8655 = vmatpush1.msra.mxu0 %v8042
  %8656 = vmatprep.subr.mxu0 0.0
  %8657 = vmatpush1.msra.mxu0 0.0
  %8658 = vmatprep.subr.mxu0 0.0
  %8659 = vmatpush1.msra.mxu0 0.0
  %8660 = vmatprep.subr.mxu0 0.0
  %8661 = vmatpush1.msra.mxu0 0.0
  %8662 = vmatprep.subr.mxu0 0.0
  %8663 = vmatpush1.msra.mxu0 0.0
  %8664 = vmatprep.subr.mxu0 0.0
  %8665 = vmatpush1.msra.mxu0 0.0
  %8666 = vmatprep.subr.mxu0 0.0
  %8667 = vmatpush1.msra.mxu0 0.0
  %8668 = vmatprep.subr.mxu0 0.0
  %8669 = vmatpush1.msra.mxu0 0.0
  %8670 = vmatprep.subr.mxu0 0.0
  %8671 = vmatpush1.msra.mxu0 0.0
  %8672 = vmatprep.subr.mxu0 0.0
  %8673 = vmatpush1.msra.mxu0 0.0
  %8674 = vmatprep.subr.mxu0 0.0
  %8675 = vmatpush1.msra.mxu0 0.0
  %8676 = vmatprep.subr.mxu0 0.0
  %8677 = vmatpush1.msra.mxu0 0.0
  %8678 = vmatprep.subr.mxu0 0.0
  %8679 = vmatpush1.msra.mxu0 0.0
  %8680 = vmatprep.subr.mxu0 0.0
  %8681 = vmatpush1.msra.mxu0 0.0
  %8682 = vmatprep.subr.mxu0 0.0
  %8683 = vmatpush1.msra.mxu0 0.0
  %8684 = vmatprep.subr.mxu0 0.0
  %8685 = vmatpush1.msra.mxu0 0.0
  %8686 = vmatprep.subr.mxu0 0.0
  %8687 = vmatpush1.msra.mxu0 0.0
  %8688 = vmatprep.subr.mxu0 0.0
  %8689 = vmatpush1.msra.mxu0 0.0
  %8690 = vmatprep.subr.mxu0 0.0
  %8691 = vmatpush1.msra.mxu0 0.0
  %8692 = vmatprep.subr.mxu0 0.0
  %8693 = vmatpush1.msra.mxu0 0.0
  %8694 = vmatprep.subr.mxu0 0.0
  %8695 = vmatpush1.msra.mxu0 0.0
  %8696 = vmatprep.subr.mxu0 0.0
  %8697 = vmatpush1.msra.mxu0 0.0
  %8698 = vmatprep.subr.mxu0 0.0
  %8699 = vmatpush1.msra.mxu0 0.0
  %8700 = vmatprep.subr.mxu0 0.0
  %8701 = vmatpush1.msra.mxu0 0.0
  %8702 = vmatprep.subr.mxu0 0.0
  %8703 = vmatpush1.msra.mxu0 0.0
  %8704 = vmatprep.subr.mxu0 0.0
  %8705 = vmatpush1.msra.mxu0 0.0
  %8706 = vmatprep.subr.mxu0 0.0
  %8707 = vmatpush1.msra.mxu0 0.0
  %8708 = vmatprep.subr.mxu0 0.0
  %8709 = vmatpush1.msra.mxu0 0.0
  %8710 = vmatprep.subr.mxu0 0.0
  %8711 = vmatpush1.msra.mxu0 0.0
  %8712 = vmatprep.subr.mxu0 0.0
  %8713 = vmatpush1.msra.mxu0 0.0
  %8714 = vmatprep.subr.mxu0 0.0
  %8715 = vmatpush1.msra.mxu0 0.0
  %8716 = vmatprep.subr.mxu0 0.0
  %8717 = vmatpush1.msra.mxu0 0.0
  %8718 = vmatprep.mubr.f32.mxu0 0.0
  %8719 = vmatmul.mubr.f32.gmra.mrb[0].mxu0 %v8008
  %v8720 = vpop.f32.mrb[0].mxu0
  %v8721 = vadd.f32 0.0, %v8720
  %v8722 = vpop.f32.mrb[0].mxu0
  %v8723 = vadd.f32 0.0, %v8722
  %8724 = vdwg.mxu0
  %8725 = vmatprep.subr.mxu0 %v8048
  %8726 = vmatpush1.msra.mxu0 %v8046
  %8727 = vmatprep.subr.mxu0 0.0
  %8728 = vmatpush1.msra.mxu0 0.0
  %8729 = vmatprep.subr.mxu0 0.0
  %8730 = vmatpush1.msra.mxu0 0.0
  %8731 = vmatprep.subr.mxu0 0.0
  %8732 = vmatpush1.msra.mxu0 0.0
  %8733 = vmatprep.subr.mxu0 0.0
  %8734 = vmatpush1.msra.mxu0 0.0
  %8735 = vmatprep.subr.mxu0 0.0
  %8736 = vmatpush1.msra.mxu0 0.0
  %8737 = vmatprep.subr.mxu0 0.0
  %8738 = vmatpush1.msra.mxu0 0.0
  %8739 = vmatprep.subr.mxu0 0.0
  %8740 = vmatpush1.msra.mxu0 0.0
  %8741 = vmatprep.subr.mxu0 0.0
  %8742 = vmatpush1.msra.mxu0 0.0
  %8743 = vmatprep.subr.mxu0 0.0
  %8744 = vmatpush1.msra.mxu0 0.0
  %8745 = vmatprep.subr.mxu0 0.0
  %8746 = vmatpush1.msra.mxu0 0.0
  %8747 = vmatprep.subr.mxu0 0.0
  %8748 = vmatpush1.msra.mxu0 0.0
  %8749 = vmatprep.subr.mxu0 0.0
  %8750 = vmatpush1.msra.mxu0 0.0
  %8751 = vmatprep.subr.mxu0 0.0
  %8752 = vmatpush1.msra.mxu0 0.0
  %8753 = vmatprep.subr.mxu0 0.0
  %8754 = vmatpush1.msra.mxu0 0.0
  %8755 = vmatprep.subr.mxu0 0.0
  %8756 = vmatpush1.msra.mxu0 0.0
  %8757 = vmatprep.subr.mxu0 0.0
  %8758 = vmatpush1.msra.mxu0 0.0
  %8759 = vmatprep.subr.mxu0 0.0
  %8760 = vmatpush1.msra.mxu0 0.0
  %8761 = vmatprep.subr.mxu0 0.0
  %8762 = vmatpush1.msra.mxu0 0.0
  %8763 = vmatprep.subr.mxu0 0.0
  %8764 = vmatpush1.msra.mxu0 0.0
  %8765 = vmatprep.subr.mxu0 0.0
  %8766 = vmatpush1.msra.mxu0 0.0
  %8767 = vmatprep.subr.mxu0 0.0
  %8768 = vmatpush1.msra.mxu0 0.0
  %8769 = vmatprep.subr.mxu0 0.0
  %8770 = vmatpush1.msra.mxu0 0.0
  %8771 = vmatprep.subr.mxu0 0.0
  %8772 = vmatpush1.msra.mxu0 0.0
  %8773 = vmatprep.subr.mxu0 0.0
  %8774 = vmatpush1.msra.mxu0 0.0
  %8775 = vmatprep.subr.mxu0 0.0
  %8776 = vmatpush1.msra.mxu0 0.0
  %8777 = vmatprep.subr.mxu0 0.0
  %8778 = vmatpush1.msra.mxu0 0.0
  %8779 = vmatprep.subr.mxu0 0.0
  %8780 = vmatpush1.msra.mxu0 0.0
  %8781 = vmatprep.subr.mxu0 0.0
  %8782 = vmatpush1.msra.mxu0 0.0
  %8783 = vmatprep.subr.mxu0 0.0
  %8784 = vmatpush1.msra.mxu0 0.0
  %8785 = vmatprep.subr.mxu0 0.0
  %8786 = vmatpush1.msra.mxu0 0.0
  %8787 = vmatprep.subr.mxu0 0.0
  %8788 = vmatpush1.msra.mxu0 0.0
  %8789 = vmatprep.mubr.f32.mxu0 0.0
  %8790 = vmatmul.mubr.f32.gmra.mrb[0].mxu0 %v8008
  %v8791 = vpop.f32.mrb[0].mxu0
  %v8792 = vadd.f32 0.0, %v8791
  %v8793 = vpop.f32.mrb[0].mxu0
  %v8794 = vadd.f32 0.0, %v8793
  %8795 = vdwg.mxu0
  %8796 = vmatprep.subr.mxu0 %v8052
  %8797 = vmatpush1.msra.mxu0 %v8050
  %8798 = vmatprep.subr.mxu0 0.0
  %8799 = vmatpush1.msra.mxu0 0.0
  %8800 = vmatprep.subr.mxu0 0.0
  %8801 = vmatpush1.msra.mxu0 0.0
  %8802 = vmatprep.subr.mxu0 0.0
  %8803 = vmatpush1.msra.mxu0 0.0
  %8804 = vmatprep.subr.mxu0 0.0
  %8805 = vmatpush1.msra.mxu0 0.0
  %8806 = vmatprep.subr.mxu0 0.0
  %8807 = vmatpush1.msra.mxu0 0.0
  %8808 = vmatprep.subr.mxu0 0.0
  %8809 = vmatpush1.msra.mxu0 0.0
  %8810 = vmatprep.subr.mxu0 0.0
  %8811 = vmatpush1.msra.mxu0 0.0
  %8812 = vmatprep.subr.mxu0 0.0
  %8813 = vmatpush1.msra.mxu0 0.0
  %8814 = vmatprep.subr.mxu0 0.0
  %8815 = vmatpush1.msra.mxu0 0.0
  %8816 = vmatprep.subr.mxu0 0.0
  %8817 = vmatpush1.msra.mxu0 0.0
  %8818 = vmatprep.subr.mxu0 0.0
  %8819 = vmatpush1.msra.mxu0 0.0
  %8820 = vmatprep.subr.mxu0 0.0
  %8821 = vmatpush1.msra.mxu0 0.0
  %8822 = vmatprep.subr.mxu0 0.0
  %8823 = vmatpush1.msra.mxu0 0.0
  %8824 = vmatprep.subr.mxu0 0.0
  %8825 = vmatpush1.msra.mxu0 0.0
  %8826 = vmatprep.subr.mxu0 0.0
  %8827 = vmatpush1.msra.mxu0 0.0
  %8828 = vmatprep.subr.mxu0 0.0
  %8829 = vmatpush1.msra.mxu0 0.0
  %8830 = vmatprep.subr.mxu0 0.0
  %8831 = vmatpush1.msra.mxu0 0.0
  %8832 = vmatprep.subr.mxu0 0.0
  %8833 = vmatpush1.msra.mxu0 0.0
  %8834 = vmatprep.subr.mxu0 0.0
  %8835 = vmatpush1.msra.mxu0 0.0
  %8836 = vmatprep.subr.mxu0 0.0
  %8837 = vmatpush1.msra.mxu0 0.0
  %8838 = vmatprep.subr.mxu0 0.0
  %8839 = vmatpush1.msra.mxu0 0.0
  %8840 = vmatprep.subr.mxu0 0.0
  %8841 = vmatpush1.msra.mxu0 0.0
  %8842 = vmatprep.subr.mxu0 0.0
  %8843 = vmatpush1.msra.mxu0 0.0
  %8844 = vmatprep.subr.mxu0 0.0
  %8845 = vmatpush1.msra.mxu0 0.0
  %8846 = vmatprep.subr.mxu0 0.0
  %8847 = vmatpush1.msra.mxu0 0.0
  %8848 = vmatprep.subr.mxu0 0.0
  %8849 = vmatpush1.msra.mxu0 0.0
  %8850 = vmatprep.subr.mxu0 0.0
  %8851 = vmatpush1.msra.mxu0 0.0
  %8852 = vmatprep.subr.mxu0 0.0
  %8853 = vmatpush1.msra.mxu0 0.0
  %8854 = vmatprep.subr.mxu0 0.0
  %8855 = vmatpush1.msra.mxu0 0.0
  %8856 = vmatprep.subr.mxu0 0.0
  %8857 = vmatpush1.msra.mxu0 0.0
  %8858 = vmatprep.subr.mxu0 0.0
  %8859 = vmatpush1.msra.mxu0 0.0
  %8860 = vmatprep.mubr.f32.mxu0 0.0
  %8861 = vmatmul.mubr.f32.gmra.mrb[0].mxu0 %v8008
  %v8862 = vpop.f32.mrb[0].mxu0
  %v8863 = vadd.f32 0.0, %v8862
  %v8864 = vpop.f32.mrb[0].mxu0
  %v8865 = vadd.f32 0.0, %v8864
  %8866 = vdwg.mxu0
  %8867 = vmatprep.subr.mxu0 %v8056
  %8868 = vmatpush1.msra.mxu0 %v8054
  %8869 = vmatprep.subr.mxu0 0.0
  %8870 = vmatpush1.msra.mxu0 0.0
  %8871 = vmatprep.subr.mxu0 0.0
  %8872 = vmatpush1.msra.mxu0 0.0
  %8873 = vmatprep.subr.mxu0 0.0
  %8874 = vmatpush1.msra.mxu0 0.0
  %8875 = vmatprep.subr.mxu0 0.0
  %8876 = vmatpush1.msra.mxu0 0.0
  %8877 = vmatprep.subr.mxu0 0.0
  %8878 = vmatpush1.msra.mxu0 0.0
  %8879 = vmatprep.subr.mxu0 0.0
  %8880 = vmatpush1.msra.mxu0 0.0
  %8881 = vmatprep.subr.mxu0 0.0
  %8882 = vmatpush1.msra.mxu0 0.0
  %8883 = vmatprep.subr.mxu0 0.0
  %8884 = vmatpush1.msra.mxu0 0.0
  %8885 = vmatprep.subr.mxu0 0.0
  %8886 = vmatpush1.msra.mxu0 0.0
  %8887 = vmatprep.subr.mxu0 0.0
  %8888 = vmatpush1.msra.mxu0 0.0
  %8889 = vmatprep.subr.mxu0 0.0
  %8890 = vmatpush1.msra.mxu0 0.0
  %8891 = vmatprep.subr.mxu0 0.0
  %8892 = vmatpush1.msra.mxu0 0.0
  %8893 = vmatprep.subr.mxu0 0.0
  %8894 = vmatpush1.msra.mxu0 0.0
  %8895 = vmatprep.subr.mxu0 0.0
  %8896 = vmatpush1.msra.mxu0 0.0
  %8897 = vmatprep.subr.mxu0 0.0
  %8898 = vmatpush1.msra.mxu0 0.0
  %8899 = vmatprep.subr.mxu0 0.0
  %8900 = vmatpush1.msra.mxu0 0.0
  %8901 = vmatprep.subr.mxu0 0.0
  %8902 = vmatpush1.msra.mxu0 0.0
  %8903 = vmatprep.subr.mxu0 0.0
  %8904 = vmatpush1.msra.mxu0 0.0
  %8905 = vmatprep.subr.mxu0 0.0
  %8906 = vmatpush1.msra.mxu0 0.0
  %8907 = vmatprep.subr.mxu0 0.0
  %8908 = vmatpush1.msra.mxu0 0.0
  %8909 = vmatprep.subr.mxu0 0.0
  %8910 = vmatpush1.msra.mxu0 0.0
  %8911 = vmatprep.subr.mxu0 0.0
  %8912 = vmatpush1.msra.mxu0 0.0
  %8913 = vmatprep.subr.mxu0 0.0
  %8914 = vmatpush1.msra.mxu0 0.0
  %8915 = vmatprep.subr.mxu0 0.0
  %8916 = vmatpush1.msra.mxu0 0.0
  %8917 = vmatprep.subr.mxu0 0.0
  %8918 = vmatpush1.msra.mxu0 0.0
  %8919 = vmatprep.subr.mxu0 0.0
  %8920 = vmatpush1.msra.mxu0 0.0
  %8921 = vmatprep.subr.mxu0 0.0
  %8922 = vmatpush1.msra.mxu0 0.0
  %8923 = vmatprep.subr.mxu0 0.0
  %8924 = vmatpush1.msra.mxu0 0.0
  %8925 = vmatprep.subr.mxu0 0.0
  %8926 = vmatpush1.msra.mxu0 0.0
  %8927 = vmatprep.subr.mxu0 0.0
  %8928 = vmatpush1.msra.mxu0 0.0
  %8929 = vmatprep.subr.mxu0 0.0
  %8930 = vmatpush1.msra.mxu0 0.0
  %8931 = vmatprep.mubr.f32.mxu0 0.0
  %8932 = vmatmul.mubr.f32.gmra.mrb[0].mxu0 %v8008
  %v8933 = vpop.f32.mrb[0].mxu0
  %v8934 = vadd.f32 0.0, %v8933
  %v8935 = vpop.f32.mrb[0].mxu0
  %v8936 = vadd.f32 0.0, %v8935
  %8937 = vdwg.mxu0
  %8938 = vmatprep.subr.mxu0 %v8060
  %8939 = vmatpush1.msra.mxu0 %v8058
  %8940 = vmatprep.subr.mxu0 0.0
  %8941 = vmatpush1.msra.mxu0 0.0
  %8942 = vmatprep.subr.mxu0 0.0
  %8943 = vmatpush1.msra.mxu0 0.0
  %8944 = vmatprep.subr.mxu0 0.0
  %8945 = vmatpush1.msra.mxu0 0.0
  %8946 = vmatprep.subr.mxu0 0.0
  %8947 = vmatpush1.msra.mxu0 0.0
  %8948 = vmatprep.subr.mxu0 0.0
  %8949 = vmatpush1.msra.mxu0 0.0
  %8950 = vmatprep.subr.mxu0 0.0
  %8951 = vmatpush1.msra.mxu0 0.0
  %8952 = vmatprep.subr.mxu0 0.0
  %8953 = vmatpush1.msra.mxu0 0.0
  %8954 = vmatprep.subr.mxu0 0.0
  %8955 = vmatpush1.msra.mxu0 0.0
  %8956 = vmatprep.subr.mxu0 0.0
  %8957 = vmatpush1.msra.mxu0 0.0
  %8958 = vmatprep.subr.mxu0 0.0
  %8959 = vmatpush1.msra.mxu0 0.0
  %8960 = vmatprep.subr.mxu0 0.0
  %8961 = vmatpush1.msra.mxu0 0.0
  %8962 = vmatprep.subr.mxu0 0.0
  %8963 = vmatpush1.msra.mxu0 0.0
  %8964 = vmatprep.subr.mxu0 0.0
  %8965 = vmatpush1.msra.mxu0 0.0
  %8966 = vmatprep.subr.mxu0 0.0
  %8967 = vmatpush1.msra.mxu0 0.0
  %8968 = vmatprep.subr.mxu0 0.0
  %8969 = vmatpush1.msra.mxu0 0.0
  %8970 = vmatprep.subr.mxu0 0.0
  %8971 = vmatpush1.msra.mxu0 0.0
  %8972 = vmatprep.subr.mxu0 0.0
  %8973 = vmatpush1.msra.mxu0 0.0
  %8974 = vmatprep.subr.mxu0 0.0
  %8975 = vmatpush1.msra.mxu0 0.0
  %8976 = vmatprep.subr.mxu0 0.0
  %8977 = vmatpush1.msra.mxu0 0.0
  %8978 = vmatprep.subr.mxu0 0.0
  %8979 = vmatpush1.msra.mxu0 0.0
  %8980 = vmatprep.subr.mxu0 0.0
  %8981 = vmatpush1.msra.mxu0 0.0
  %8982 = vmatprep.subr.mxu0 0.0
  %8983 = vmatpush1.msra.mxu0 0.0
  %8984 = vmatprep.subr.mxu0 0.0
  %8985 = vmatpush1.msra.mxu0 0.0
  %8986 = vmatprep.subr.mxu0 0.0
  %8987 = vmatpush1.msra.mxu0 0.0
  %8988 = vmatprep.subr.mxu0 0.0
  %8989 = vmatpush1.msra.mxu0 0.0
  %8990 = vmatprep.subr.mxu0 0.0
  %8991 = vmatpush1.msra.mxu0 0.0
  %8992 = vmatprep.subr.mxu0 0.0
  %8993 = vmatpush1.msra.mxu0 0.0
  %8994 = vmatprep.subr.mxu0 0.0
  %8995 = vmatpush1.msra.mxu0 0.0
  %8996 = vmatprep.subr.mxu0 0.0
  %8997 = vmatpush1.msra.mxu0 0.0
  %8998 = vmatprep.subr.mxu0 0.0
  %8999 = vmatpush1.msra.mxu0 0.0
  %9000 = vmatprep.subr.mxu0 0.0
  %9001 = vmatpush1.msra.mxu0 0.0
  %9002 = vmatprep.mubr.f32.mxu0 0.0
  %9003 = vmatmul.mubr.f32.gmra.mrb[0].mxu0 %v8008
  %v9004 = vpop.f32.mrb[0].mxu0
  %v9005 = vadd.f32 0.0, %v9004
  %v9006 = vpop.f32.mrb[0].mxu0
  %v9007 = vadd.f32 0.0, %v9006
  %9008 = vdwg.mxu0
  %9009 = vmatprep.subr.mxu0 %v8064
  %9010 = vmatpush1.msra.mxu0 %v8062
  %9011 = vmatprep.subr.mxu0 0.0
  %9012 = vmatpush1.msra.mxu0 0.0
  %9013 = vmatprep.subr.mxu0 0.0
  %9014 = vmatpush1.msra.mxu0 0.0
  %9015 = vmatprep.subr.mxu0 0.0
  %9016 = vmatpush1.msra.mxu0 0.0
  %9017 = vmatprep.subr.mxu0 0.0
  %9018 = vmatpush1.msra.mxu0 0.0
  %9019 = vmatprep.subr.mxu0 0.0
  %9020 = vmatpush1.msra.mxu0 0.0
  %9021 = vmatprep.subr.mxu0 0.0
  %9022 = vmatpush1.msra.mxu0 0.0
  %9023 = vmatprep.subr.mxu0 0.0
  %9024 = vmatpush1.msra.mxu0 0.0
  %9025 = vmatprep.subr.mxu0 0.0
  %9026 = vmatpush1.msra.mxu0 0.0
  %9027 = vmatprep.subr.mxu0 0.0
  %9028 = vmatpush1.msra.mxu0 0.0
  %9029 = vmatprep.subr.mxu0 0.0
  %9030 = vmatpush1.msra.mxu0 0.0
  %9031 = vmatprep.subr.mxu0 0.0
  %9032 = vmatpush1.msra.mxu0 0.0
  %9033 = vmatprep.subr.mxu0 0.0
  %9034 = vmatpush1.msra.mxu0 0.0
  %9035 = vmatprep.subr.mxu0 0.0
  %9036 = vmatpush1.msra.mxu0 0.0
  %9037 = vmatprep.subr.mxu0 0.0
  %9038 = vmatpush1.msra.mxu0 0.0
  %9039 = vmatprep.subr.mxu0 0.0
  %9040 = vmatpush1.msra.mxu0 0.0
  %9041 = vmatprep.subr.mxu0 0.0
  %9042 = vmatpush1.msra.mxu0 0.0
  %9043 = vmatprep.subr.mxu0 0.0
  %9044 = vmatpush1.msra.mxu0 0.0
  %9045 = vmatprep.subr.mxu0 0.0
  %9046 = vmatpush1.msra.mxu0 0.0
  %9047 = vmatprep.subr.mxu0 0.0
  %9048 = vmatpush1.msra.mxu0 0.0
  %9049 = vmatprep.subr.mxu0 0.0
  %9050 = vmatpush1.msra.mxu0 0.0
  %9051 = vmatprep.subr.mxu0 0.0
  %9052 = vmatpush1.msra.mxu0 0.0
  %9053 = vmatprep.subr.mxu0 0.0
  %9054 = vmatpush1.msra.mxu0 0.0
  %9055 = vmatprep.subr.mxu0 0.0
  %9056 = vmatpush1.msra.mxu0 0.0
  %9057 = vmatprep.subr.mxu0 0.0
  %9058 = vmatpush1.msra.mxu0 0.0
  %9059 = vmatprep.subr.mxu0 0.0
  %9060 = vmatpush1.msra.mxu0 0.0
  %9061 = vmatprep.subr.mxu0 0.0
  %9062 = vmatpush1.msra.mxu0 0.0
  %9063 = vmatprep.subr.mxu0 0.0
  %9064 = vmatpush1.msra.mxu0 0.0
  %9065 = vmatprep.subr.mxu0 0.0
  %9066 = vmatpush1.msra.mxu0 0.0
  %9067 = vmatprep.subr.mxu0 0.0
  %9068 = vmatpush1.msra.mxu0 0.0
  %9069 = vmatprep.subr.mxu0 0.0
  %9070 = vmatpush1.msra.mxu0 0.0
  %9071 = vmatprep.subr.mxu0 0.0
  %9072 = vmatpush1.msra.mxu0 0.0
  %9073 = vmatprep.mubr.f32.mxu0 0.0
  %9074 = vmatmul.mubr.f32.gmra.mrb[0].mxu0 %v8008
  %v9075 = vpop.f32.mrb[0].mxu0
  %v9076 = vadd.f32 0.0, %v9075
  %v9077 = vpop.f32.mrb[0].mxu0
  %v9078 = vadd.f32 0.0, %v9077
  %9079 = vdwg.mxu0
  %9080 = vmatprep.subr.mxu0 %v8068
  %9081 = vmatpush1.msra.mxu0 %v8066
  %9082 = vmatprep.subr.mxu0 0.0
  %9083 = vmatpush1.msra.mxu0 0.0
  %9084 = vmatprep.subr.mxu0 0.0
  %9085 = vmatpush1.msra.mxu0 0.0
  %9086 = vmatprep.subr.mxu0 0.0
  %9087 = vmatpush1.msra.mxu0 0.0
  %9088 = vmatprep.subr.mxu0 0.0
  %9089 = vmatpush1.msra.mxu0 0.0
  %9090 = vmatprep.subr.mxu0 0.0
  %9091 = vmatpush1.msra.mxu0 0.0
  %9092 = vmatprep.subr.mxu0 0.0
  %9093 = vmatpush1.msra.mxu0 0.0
  %9094 = vmatprep.subr.mxu0 0.0
  %9095 = vmatpush1.msra.mxu0 0.0
  %9096 = vmatprep.subr.mxu0 0.0
  %9097 = vmatpush1.msra.mxu0 0.0
  %9098 = vmatprep.subr.mxu0 0.0
  %9099 = vmatpush1.msra.mxu0 0.0
  %9100 = vmatprep.subr.mxu0 0.0
  %9101 = vmatpush1.msra.mxu0 0.0
  %9102 = vmatprep.subr.mxu0 0.0
  %9103 = vmatpush1.msra.mxu0 0.0
  %9104 = vmatprep.subr.mxu0 0.0
  %9105 = vmatpush1.msra.mxu0 0.0
  %9106 = vmatprep.subr.mxu0 0.0
  %9107 = vmatpush1.msra.mxu0 0.0
  %9108 = vmatprep.subr.mxu0 0.0
  %9109 = vmatpush1.msra.mxu0 0.0
  %9110 = vmatprep.subr.mxu0 0.0
  %9111 = vmatpush1.msra.mxu0 0.0
  %9112 = vmatprep.subr.mxu0 0.0
  %9113 = vmatpush1.msra.mxu0 0.0
  %9114 = vmatprep.subr.mxu0 0.0
  %9115 = vmatpush1.msra.mxu0 0.0
  %9116 = vmatprep.subr.mxu0 0.0
  %9117 = vmatpush1.msra.mxu0 0.0
  %9118 = vmatprep.subr.mxu0 0.0
  %9119 = vmatpush1.msra.mxu0 0.0
  %9120 = vmatprep.subr.mxu0 0.0
  %9121 = vmatpush1.msra.mxu0 0.0
  %9122 = vmatprep.subr.mxu0 0.0
  %9123 = vmatpush1.msra.mxu0 0.0
  %9124 = vmatprep.subr.mxu0 0.0
  %9125 = vmatpush1.msra.mxu0 0.0
  %9126 = vmatprep.subr.mxu0 0.0
  %9127 = vmatpush1.msra.mxu0 0.0
  %9128 = vmatprep.subr.mxu0 0.0
  %9129 = vmatpush1.msra.mxu0 0.0
  %9130 = vmatprep.subr.mxu0 0.0
  %9131 = vmatpush1.msra.mxu0 0.0
  %9132 = vmatprep.subr.mxu0 0.0
  %9133 = vmatpush1.msra.mxu0 0.0
  %9134 = vmatprep.subr.mxu0 0.0
  %9135 = vmatpush1.msra.mxu0 0.0
  %9136 = vmatprep.subr.mxu0 0.0
  %9137 = vmatpush1.msra.mxu0 0.0
  %9138 = vmatprep.subr.mxu0 0.0
  %9139 = vmatpush1.msra.mxu0 0.0
  %9140 = vmatprep.subr.mxu0 0.0
  %9141 = vmatpush1.msra.mxu0 0.0
  %9142 = vmatprep.subr.mxu0 0.0
  %9143 = vmatpush1.msra.mxu0 0.0
  %9144 = vmatprep.mubr.f32.mxu0 0.0
  %9145 = vmatmul.mubr.f32.gmra.mrb[0].mxu0 %v8008
  %v9146 = vpop.f32.mrb[0].mxu0
  %v9147 = vadd.f32 0.0, %v9146
  %v9148 = vpop.f32.mrb[0].mxu0
  %v9149 = vadd.f32 0.0, %v9148
  %9150 = vdwg.mxu0
  %9151 = vmatprep.subr.mxu0 %v8072
  %9152 = vmatpush1.msra.mxu0 %v8070
  %9153 = vmatprep.subr.mxu0 0.0
  %9154 = vmatpush1.msra.mxu0 0.0
  %9155 = vmatprep.subr.mxu0 0.0
  %9156 = vmatpush1.msra.mxu0 0.0
  %9157 = vmatprep.subr.mxu0 0.0
  %9158 = vmatpush1.msra.mxu0 0.0
  %9159 = vmatprep.subr.mxu0 0.0
  %9160 = vmatpush1.msra.mxu0 0.0
  %9161 = vmatprep.subr.mxu0 0.0
  %9162 = vmatpush1.msra.mxu0 0.0
  %9163 = vmatprep.subr.mxu0 0.0
  %9164 = vmatpush1.msra.mxu0 0.0
  %9165 = vmatprep.subr.mxu0 0.0
  %9166 = vmatpush1.msra.mxu0 0.0
  %9167 = vmatprep.subr.mxu0 0.0
  %9168 = vmatpush1.msra.mxu0 0.0
  %9169 = vmatprep.subr.mxu0 0.0
  %9170 = vmatpush1.msra.mxu0 0.0
  %9171 = vmatprep.subr.mxu0 0.0
  %9172 = vmatpush1.msra.mxu0 0.0
  %9173 = vmatprep.subr.mxu0 0.0
  %9174 = vmatpush1.msra.mxu0 0.0
  %9175 = vmatprep.subr.mxu0 0.0
  %9176 = vmatpush1.msra.mxu0 0.0
  %9177 = vmatprep.subr.mxu0 0.0
  %9178 = vmatpush1.msra.mxu0 0.0
  %9179 = vmatprep.subr.mxu0 0.0
  %9180 = vmatpush1.msra.mxu0 0.0
  %9181 = vmatprep.subr.mxu0 0.0
  %9182 = vmatpush1.msra.mxu0 0.0
  %9183 = vmatprep.subr.mxu0 0.0
  %9184 = vmatpush1.msra.mxu0 0.0
  %9185 = vmatprep.subr.mxu0 0.0
  %9186 = vmatpush1.msra.mxu0 0.0
  %9187 = vmatprep.subr.mxu0 0.0
  %9188 = vmatpush1.msra.mxu0 0.0
  %9189 = vmatprep.subr.mxu0 0.0
  %9190 = vmatpush1.msra.mxu0 0.0
  %9191 = vmatprep.subr.mxu0 0.0
  %9192 = vmatpush1.msra.mxu0 0.0
  %9193 = vmatprep.subr.mxu0 0.0
  %9194 = vmatpush1.msra.mxu0 0.0
  %9195 = vmatprep.subr.mxu0 0.0
  %9196 = vmatpush1.msra.mxu0 0.0
  %9197 = vmatprep.subr.mxu0 0.0
  %9198 = vmatpush1.msra.mxu0 0.0
  %9199 = vmatprep.subr.mxu0 0.0
  %9200 = vmatpush1.msra.mxu0 0.0
  %9201 = vmatprep.subr.mxu0 0.0
  %9202 = vmatpush1.msra.mxu0 0.0
  %9203 = vmatprep.subr.mxu0 0.0
  %9204 = vmatpush1.msra.mxu0 0.0
  %9205 = vmatprep.subr.mxu0 0.0
  %9206 = vmatpush1.msra.mxu0 0.0
  %9207 = vmatprep.subr.mxu0 0.0
  %9208 = vmatpush1.msra.mxu0 0.0
  %9209 = vmatprep.subr.mxu0 0.0
  %9210 = vmatpush1.msra.mxu0 0.0
  %9211 = vmatprep.subr.mxu0 0.0
  %9212 = vmatpush1.msra.mxu0 0.0
  %9213 = vmatprep.subr.mxu0 0.0
  %9214 = vmatpush1.msra.mxu0 0.0
  %9215 = vmatprep.mubr.f32.mxu0 0.0
  %9216 = vmatmul.mubr.f32.gmra.mrb[0].mxu0 %v8008
  %v9217 = vpop.f32.mrb[0].mxu0
  %v9218 = vadd.f32 0.0, %v9217
  %v9219 = vpop.f32.mrb[0].mxu0
  %v9220 = vadd.f32 0.0, %v9219
  %9221 = vdwg.mxu0
  %9222 = vmatprep.subr.mxu0 %v8076
  %9223 = vmatpush1.msra.mxu0 %v8074
  %9224 = vmatprep.subr.mxu0 0.0
  %9225 = vmatpush1.msra.mxu0 0.0
  %9226 = vmatprep.subr.mxu0 0.0
  %9227 = vmatpush1.msra.mxu0 0.0
  %9228 = vmatprep.subr.mxu0 0.0
  %9229 = vmatpush1.msra.mxu0 0.0
  %9230 = vmatprep.subr.mxu0 0.0
  %9231 = vmatpush1.msra.mxu0 0.0
  %9232 = vmatprep.subr.mxu0 0.0
  %9233 = vmatpush1.msra.mxu0 0.0
  %9234 = vmatprep.subr.mxu0 0.0
  %9235 = vmatpush1.msra.mxu0 0.0
  %9236 = vmatprep.subr.mxu0 0.0
  %9237 = vmatpush1.msra.mxu0 0.0
  %9238 = vmatprep.subr.mxu0 0.0
  %9239 = vmatpush1.msra.mxu0 0.0
  %9240 = vmatprep.subr.mxu0 0.0
  %9241 = vmatpush1.msra.mxu0 0.0
  %9242 = vmatprep.subr.mxu0 0.0
  %9243 = vmatpush1.msra.mxu0 0.0
  %9244 = vmatprep.subr.mxu0 0.0
  %9245 = vmatpush1.msra.mxu0 0.0
  %9246 = vmatprep.subr.mxu0 0.0
  %9247 = vmatpush1.msra.mxu0 0.0
  %9248 = vmatprep.subr.mxu0 0.0
  %9249 = vmatpush1.msra.mxu0 0.0
  %9250 = vmatprep.subr.mxu0 0.0
  %9251 = vmatpush1.msra.mxu0 0.0
  %9252 = vmatprep.subr.mxu0 0.0
  %9253 = vmatpush1.msra.mxu0 0.0
  %9254 = vmatprep.subr.mxu0 0.0
  %9255 = vmatpush1.msra.mxu0 0.0
  %9256 = vmatprep.subr.mxu0 0.0
  %9257 = vmatpush1.msra.mxu0 0.0
  %9258 = vmatprep.subr.mxu0 0.0
  %9259 = vmatpush1.msra.mxu0 0.0
  %9260 = vmatprep.subr.mxu0 0.0
  %9261 = vmatpush1.msra.mxu0 0.0
  %9262 = vmatprep.subr.mxu0 0.0
  %9263 = vmatpush1.msra.mxu0 0.0
  %9264 = vmatprep.subr.mxu0 0.0
  %9265 = vmatpush1.msra.mxu0 0.0
  %9266 = vmatprep.subr.mxu0 0.0
  %9267 = vmatpush1.msra.mxu0 0.0
  %9268 = vmatprep.subr.mxu0 0.0
  %9269 = vmatpush1.msra.mxu0 0.0
  %9270 = vmatprep.subr.mxu0 0.0
  %9271 = vmatpush1.msra.mxu0 0.0
  %9272 = vmatprep.subr.mxu0 0.0
  %9273 = vmatpush1.msra.mxu0 0.0
  %9274 = vmatprep.subr.mxu0 0.0
  %9275 = vmatpush1.msra.mxu0 0.0
  %9276 = vmatprep.subr.mxu0 0.0
  %9277 = vmatpush1.msra.mxu0 0.0
  %9278 = vmatprep.subr.mxu0 0.0
  %9279 = vmatpush1.msra.mxu0 0.0
  %9280 = vmatprep.subr.mxu0 0.0
  %9281 = vmatpush1.msra.mxu0 0.0
  %9282 = vmatprep.subr.mxu0 0.0
  %9283 = vmatpush1.msra.mxu0 0.0
  %9284 = vmatprep.subr.mxu0 0.0
  %9285 = vmatpush1.msra.mxu0 0.0
  %9286 = vmatprep.mubr.f32.mxu0 0.0
  %9287 = vmatmul.mubr.f32.gmra.mrb[0].mxu0 %v8008
  %v9288 = vpop.f32.mrb[0].mxu0
  %v9289 = vadd.f32 0.0, %v9288
  %v9290 = vpop.f32.mrb[0].mxu0
  %v9291 = vadd.f32 0.0, %v9290
  %9292 = vdwg.mxu0
  %9293 = vmatprep.subr.mxu0 %v8080
  %9294 = vmatpush1.msra.mxu0 %v8078
  %9295 = vmatprep.subr.mxu0 0.0
  %9296 = vmatpush1.msra.mxu0 0.0
  %9297 = vmatprep.subr.mxu0 0.0
  %9298 = vmatpush1.msra.mxu0 0.0
  %9299 = vmatprep.subr.mxu0 0.0
  %9300 = vmatpush1.msra.mxu0 0.0
  %9301 = vmatprep.subr.mxu0 0.0
  %9302 = vmatpush1.msra.mxu0 0.0
  %9303 = vmatprep.subr.mxu0 0.0
  %9304 = vmatpush1.msra.mxu0 0.0
  %9305 = vmatprep.subr.mxu0 0.0
  %9306 = vmatpush1.msra.mxu0 0.0
  %9307 = vmatprep.subr.mxu0 0.0
  %9308 = vmatpush1.msra.mxu0 0.0
  %9309 = vmatprep.subr.mxu0 0.0
  %9310 = vmatpush1.msra.mxu0 0.0
  %9311 = vmatprep.subr.mxu0 0.0
  %9312 = vmatpush1.msra.mxu0 0.0
  %9313 = vmatprep.subr.mxu0 0.0
  %9314 = vmatpush1.msra.mxu0 0.0
  %9315 = vmatprep.subr.mxu0 0.0
  %9316 = vmatpush1.msra.mxu0 0.0
  %9317 = vmatprep.subr.mxu0 0.0
  %9318 = vmatpush1.msra.mxu0 0.0
  %9319 = vmatprep.subr.mxu0 0.0
  %9320 = vmatpush1.msra.mxu0 0.0
  %9321 = vmatprep.subr.mxu0 0.0
  %9322 = vmatpush1.msra.mxu0 0.0
  %9323 = vmatprep.subr.mxu0 0.0
  %9324 = vmatpush1.msra.mxu0 0.0
  %9325 = vmatprep.subr.mxu0 0.0
  %9326 = vmatpush1.msra.mxu0 0.0
  %9327 = vmatprep.subr.mxu0 0.0
  %9328 = vmatpush1.msra.mxu0 0.0
  %9329 = vmatprep.subr.mxu0 0.0
  %9330 = vmatpush1.msra.mxu0 0.0
  %9331 = vmatprep.subr.mxu0 0.0
  %9332 = vmatpush1.msra.mxu0 0.0
  %9333 = vmatprep.subr.mxu0 0.0
  %9334 = vmatpush1.msra.mxu0 0.0
  %9335 = vmatprep.subr.mxu0 0.0
  %9336 = vmatpush1.msra.mxu0 0.0
  %9337 = vmatprep.subr.mxu0 0.0
  %9338 = vmatpush1.msra.mxu0 0.0
  %9339 = vmatprep.subr.mxu0 0.0
  %9340 = vmatpush1.msra.mxu0 0.0
  %9341 = vmatprep.subr.mxu0 0.0
  %9342 = vmatpush1.msra.mxu0 0.0
  %9343 = vmatprep.subr.mxu0 0.0
  %9344 = vmatpush1.msra.mxu0 0.0
  %9345 = vmatprep.subr.mxu0 0.0
  %9346 = vmatpush1.msra.mxu0 0.0
  %9347 = vmatprep.subr.mxu0 0.0
  %9348 = vmatpush1.msra.mxu0 0.0
  %9349 = vmatprep.subr.mxu0 0.0
  %9350 = vmatpush1.msra.mxu0 0.0
  %9351 = vmatprep.subr.mxu0 0.0
  %9352 = vmatpush1.msra.mxu0 0.0
  %9353 = vmatprep.subr.mxu0 0.0
  %9354 = vmatpush1.msra.mxu0 0.0
  %9355 = vmatprep.subr.mxu0 0.0
  %9356 = vmatpush1.msra.mxu0 0.0
  %9357 = vmatprep.mubr.f32.mxu0 0.0
  %9358 = vmatmul.mubr.f32.gmra.mrb[0].mxu0 %v8008
  %v9359 = vpop.f32.mrb[0].mxu0
  %v9360 = vadd.f32 0.0, %v9359
  %v9361 = vpop.f32.mrb[0].mxu0
  %v9362 = vadd.f32 0.0, %v9361
  %9363 = vdwg.mxu0
  %9364 = vmatprep.subr.mxu0 %v8084
  %9365 = vmatpush1.msra.mxu0 %v8082
  %9366 = vmatprep.subr.mxu0 0.0
  %9367 = vmatpush1.msra.mxu0 0.0
  %9368 = vmatprep.subr.mxu0 0.0
  %9369 = vmatpush1.msra.mxu0 0.0
  %9370 = vmatprep.subr.mxu0 0.0
  %9371 = vmatpush1.msra.mxu0 0.0
  %9372 = vmatprep.subr.mxu0 0.0
  %9373 = vmatpush1.msra.mxu0 0.0
  %9374 = vmatprep.subr.mxu0 0.0
  %9375 = vmatpush1.msra.mxu0 0.0
  %9376 = vmatprep.subr.mxu0 0.0
  %9377 = vmatpush1.msra.mxu0 0.0
  %9378 = vmatprep.subr.mxu0 0.0
  %9379 = vmatpush1.msra.mxu0 0.0
  %9380 = vmatprep.subr.mxu0 0.0
  %9381 = vmatpush1.msra.mxu0 0.0
  %9382 = vmatprep.subr.mxu0 0.0
  %9383 = vmatpush1.msra.mxu0 0.0
  %9384 = vmatprep.subr.mxu0 0.0
  %9385 = vmatpush1.msra.mxu0 0.0
  %9386 = vmatprep.subr.mxu0 0.0
  %9387 = vmatpush1.msra.mxu0 0.0
  %9388 = vmatprep.subr.mxu0 0.0
  %9389 = vmatpush1.msra.mxu0 0.0
  %9390 = vmatprep.subr.mxu0 0.0
  %9391 = vmatpush1.msra.mxu0 0.0
  %9392 = vmatprep.subr.mxu0 0.0
  %9393 = vmatpush1.msra.mxu0 0.0
  %9394 = vmatprep.subr.mxu0 0.0
  %9395 = vmatpush1.msra.mxu0 0.0
  %9396 = vmatprep.subr.mxu0 0.0
  %9397 = vmatpush1.msra.mxu0 0.0
  %9398 = vmatprep.subr.mxu0 0.0
  %9399 = vmatpush1.msra.mxu0 0.0
  %9400 = vmatprep.subr.mxu0 0.0
  %9401 = vmatpush1.msra.mxu0 0.0
  %9402 = vmatprep.subr.mxu0 0.0
  %9403 = vmatpush1.msra.mxu0 0.0
  %9404 = vmatprep.subr.mxu0 0.0
  %9405 = vmatpush1.msra.mxu0 0.0
  %9406 = vmatprep.subr.mxu0 0.0
  %9407 = vmatpush1.msra.mxu0 0.0
  %9408 = vmatprep.subr.mxu0 0.0
  %9409 = vmatpush1.msra.mxu0 0.0
  %9410 = vmatprep.subr.mxu0 0.0
  %9411 = vmatpush1.msra.mxu0 0.0
  %9412 = vmatprep.subr.mxu0 0.0
  %9413 = vmatpush1.msra.mxu0 0.0
  %9414 = vmatprep.subr.mxu0 0.0
  %9415 = vmatpush1.msra.mxu0 0.0
  %9416 = vmatprep.subr.mxu0 0.0
  %9417 = vmatpush1.msra.mxu0 0.0
  %9418 = vmatprep.subr.mxu0 0.0
  %9419 = vmatpush1.msra.mxu0 0.0
  %9420 = vmatprep.subr.mxu0 0.0
  %9421 = vmatpush1.msra.mxu0 0.0
  %9422 = vmatprep.subr.mxu0 0.0
  %9423 = vmatpush1.msra.mxu0 0.0
  %9424 = vmatprep.subr.mxu0 0.0
  %9425 = vmatpush1.msra.mxu0 0.0
  %9426 = vmatprep.subr.mxu0 0.0
  %9427 = vmatpush1.msra.mxu0 0.0
  %9428 = vmatprep.mubr.f32.mxu0 0.0
  %9429 = vmatmul.mubr.f32.gmra.mrb[0].mxu0 %v8008
  %v9430 = vpop.f32.mrb[0].mxu0
  %v9431 = vadd.f32 0.0, %v9430
  %v9432 = vpop.f32.mrb[0].mxu0
  %v9433 = vadd.f32 0.0, %v9432
  %9434 = vdwg.mxu0
  %v9435 = vadd.f32 %v7850, %v8153
  %v9436 = vadd.f32 %v7851, %v8155
  %v9437 = vadd.f32 %v7852, %v8224
  %v9438 = vadd.f32 %v7853, %v8226
  %v9439 = vadd.f32 %v7854, %v8295
  %v9440 = vadd.f32 %v7855, %v8297
  %v9441 = vadd.f32 %v7856, %v8366
  %v9442 = vadd.f32 %v7857, %v8368
  %v9443 = vadd.f32 %v7858, %v8437
  %v9444 = vadd.f32 %v7859, %v8439
  %v9445 = vadd.f32 %v7860, %v8508
  %v9446 = vadd.f32 %v7861, %v8510
  %v9447 = vadd.f32 %v7862, %v8579
  %v9448 = vadd.f32 %v7863, %v8581
  %v9449 = vadd.f32 %v7864, %v8650
  %v9450 = vadd.f32 %v7865, %v8652
  %v9451 = vadd.f32 %v7866, %v8721
  %v9452 = vadd.f32 %v7867, %v8723
  %v9453 = vadd.f32 %v7868, %v8792
  %v9454 = vadd.f32 %v7869, %v8794
  %v9455 = vadd.f32 %v7870, %v8863
  %v9456 = vadd.f32 %v7871, %v8865
  %v9457 = vadd.f32 %v7872, %v8934
  %v9458 = vadd.f32 %v7873, %v8936
  %v9459 = vadd.f32 %v7874, %v9005
  %v9460 = vadd.f32 %v7875, %v9007
  %v9461 = vadd.f32 %v7876, %v9076
  %v9462 = vadd.f32 %v7877, %v9078
  %v9463 = vadd.f32 %v7878, %v9147
  %v9464 = vadd.f32 %v7879, %v9149
  %v9465 = vadd.f32 %v7880, %v9218
  %v9466 = vadd.f32 %v7881, %v9220
  %v9467 = vadd.f32 %v7882, %v9289
  %v9468 = vadd.f32 %v7883, %v9291
  %v9469 = vadd.f32 %v7884, %v9360
  %v9470 = vadd.f32 %v7885, %v9362
  %v9471 = vadd.f32 %v7886, %v9431
  %v9472 = vadd.f32 %v7887, %v9433
  %s9473 = scalar_lea.vmem %s1, 48
  %v9474 = vld [vmem:[%s9473] sm:$0xff]
  %v9475 = vcombine.high %v33, %v33
  %9476 = vrot.lane.b32.xlu0 %v60, 116
  %v9477 = vpop.permute.xlu0 %9476
  %9478 = vrot.lane.b32.xlu0 %v15, 116
  %v9479 = vpop.permute.xlu0 %9478
  %9480 = vrot.lane.b32.xlu0 %v61, 116
  %v9481 = vpop.permute.xlu0 %9480
  %9482 = vrot.lane.b32.xlu0 %v16, 116
  %v9483 = vpop.permute.xlu0 %9482
  %9484 = vrot.lane.b32.xlu0 %v62, 116
  %v9485 = vpop.permute.xlu0 %9484
  %9486 = vrot.lane.b32.xlu0 %v17, 116
  %v9487 = vpop.permute.xlu0 %9486
  %9488 = vrot.lane.b32.xlu0 %v63, 116
  %v9489 = vpop.permute.xlu0 %9488
  %9490 = vrot.lane.b32.xlu0 %v18, 116
  %v9491 = vpop.permute.xlu0 %9490
  %9492 = vrot.lane.b32.xlu0 %v64, 116
  %v9493 = vpop.permute.xlu0 %9492
  %9494 = vrot.lane.b32.xlu0 %v19, 116
  %v9495 = vpop.permute.xlu0 %9494
  %9496 = vrot.lane.b32.xlu0 %v65, 116
  %v9497 = vpop.permute.xlu0 %9496
  %9498 = vrot.lane.b32.xlu0 %v20, 116
  %v9499 = vpop.permute.xlu0 %9498
  %9500 = vrot.lane.b32.xlu0 %v66, 116
  %v9501 = vpop.permute.xlu0 %9500
  %9502 = vrot.lane.b32.xlu0 %v21, 116
  %v9503 = vpop.permute.xlu0 %9502
  %9504 = vrot.lane.b32.xlu0 %v67, 116
  %v9505 = vpop.permute.xlu0 %9504
  %9506 = vrot.lane.b32.xlu0 %v22, 116
  %v9507 = vpop.permute.xlu0 %9506
  %9508 = vrot.lane.b32.xlu0 %v68, 116
  %v9509 = vpop.permute.xlu0 %9508
  %9510 = vrot.lane.b32.xlu0 %v23, 116
  %v9511 = vpop.permute.xlu0 %9510
  %9512 = vrot.lane.b32.xlu0 %v69, 116
  %v9513 = vpop.permute.xlu0 %9512
  %9514 = vrot.lane.b32.xlu0 %v24, 116
  %v9515 = vpop.permute.xlu0 %9514
  %9516 = vrot.lane.b32.xlu0 %v70, 116
  %v9517 = vpop.permute.xlu0 %9516
  %9518 = vrot.lane.b32.xlu0 %v25, 116
  %v9519 = vpop.permute.xlu0 %9518
  %9520 = vrot.lane.b32.xlu0 %v71, 116
  %v9521 = vpop.permute.xlu0 %9520
  %9522 = vrot.lane.b32.xlu0 %v26, 116
  %v9523 = vpop.permute.xlu0 %9522
  %9524 = vrot.lane.b32.xlu0 %v72, 116
  %v9525 = vpop.permute.xlu0 %9524
  %9526 = vrot.lane.b32.xlu0 %v27, 116
  %v9527 = vpop.permute.xlu0 %9526
  %9528 = vrot.lane.b32.xlu0 %v73, 116
  %v9529 = vpop.permute.xlu0 %9528
  %9530 = vrot.lane.b32.xlu0 %v28, 116
  %v9531 = vpop.permute.xlu0 %9530
  %9532 = vrot.lane.b32.xlu0 %v74, 116
  %v9533 = vpop.permute.xlu0 %9532
  %9534 = vrot.lane.b32.xlu0 %v29, 116
  %v9535 = vpop.permute.xlu0 %9534
  %9536 = vrot.lane.b32.xlu0 %v75, 116
  %v9537 = vpop.permute.xlu0 %9536
  %9538 = vrot.lane.b32.xlu0 %v30, 116
  %v9539 = vpop.permute.xlu0 %9538
  %9540 = vrot.lane.b32.xlu0 %v76, 116
  %v9541 = vpop.permute.xlu0 %9540
  %9542 = vrot.lane.b32.xlu0 %v31, 116
  %v9543 = vpop.permute.xlu0 %9542
  %9544 = vrot.lane.b32.xlu0 %v77, 116
  %v9545 = vpop.permute.xlu0 %9544
  %9546 = vrot.lane.b32.xlu0 %v32, 116
  %v9547 = vpop.permute.xlu0 %9546
  %9548 = vrot.lane.b32.xlu0 %v78, 116
  %v9549 = vpop.permute.xlu0 %9548
  %9550 = vrot.lane.b32.xlu0 %v33, 116
  %v9551 = vpop.permute.xlu0 %9550
  %9552 = vrot.lane.b32.xlu0 %v9475, 116
  %v9553 = vpop.permute.xlu0 %9552
  %vm9554 = vcmask 949248
  %v9555 = vsel %vm9554, %v9477, %v9479
  %v9556 = vsel %vm9554, %v9479, %v9481
  %v9557 = vsel %vm9554, %v9481, %v9483
  %v9558 = vsel %vm9554, %v9483, %v9485
  %v9559 = vsel %vm9554, %v9485, %v9487
  %v9560 = vsel %vm9554, %v9487, %v9489
  %v9561 = vsel %vm9554, %v9489, %v9491
  %v9562 = vsel %vm9554, %v9491, %v9493
  %v9563 = vsel %vm9554, %v9493, %v9495
  %v9564 = vsel %vm9554, %v9495, %v9497
  %v9565 = vsel %vm9554, %v9497, %v9499
  %v9566 = vsel %vm9554, %v9499, %v9501
  %v9567 = vsel %vm9554, %v9501, %v9503
  %v9568 = vsel %vm9554, %v9503, %v9505
  %v9569 = vsel %vm9554, %v9505, %v9507
  %v9570 = vsel %vm9554, %v9507, %v9509
  %v9571 = vsel %vm9554, %v9509, %v9511
  %v9572 = vsel %vm9554, %v9511, %v9513
  %v9573 = vsel %vm9554, %v9513, %v9515
  %v9574 = vsel %vm9554, %v9515, %v9517
  %v9575 = vsel %vm9554, %v9517, %v9519
  %v9576 = vsel %vm9554, %v9519, %v9521
  %v9577 = vsel %vm9554, %v9521, %v9523
  %v9578 = vsel %vm9554, %v9523, %v9525
  %v9579 = vsel %vm9554, %v9525, %v9527
  %v9580 = vsel %vm9554, %v9527, %v9529
  %v9581 = vsel %vm9554, %v9529, %v9531
  %v9582 = vsel %vm9554, %v9531, %v9533
  %v9583 = vsel %vm9554, %v9533, %v9535
  %v9584 = vsel %vm9554, %v9535, %v9537
  %v9585 = vsel %vm9554, %v9537, %v9539
  %v9586 = vsel %vm9554, %v9539, %v9541
  %v9587 = vsel %vm9554, %v9541, %v9543
  %v9588 = vsel %vm9554, %v9543, %v9545
  %v9589 = vsel %vm9554, %v9545, %v9547
  %v9590 = vsel %vm9554, %v9547, %v9549
  %v9591 = vsel %vm9554, %v9549, %v9551
  %v9592 = vsel %vm9554, %v9551, %v9553
  %v9594 = vsel %vm79, %v9474, 0
  %v9596 = vsel %vm83, %v9555, 0
  %v9598 = vsel %vm83, %v9556, 0
  %v9600 = vsel %vm83, %v9557, 0
  %v9602 = vsel %vm83, %v9558, 0
  %v9604 = vsel %vm83, %v9559, 0
  %v9606 = vsel %vm83, %v9560, 0
  %v9608 = vsel %vm83, %v9561, 0
  %v9610 = vsel %vm83, %v9562, 0
  %v9612 = vsel %vm83, %v9563, 0
  %v9614 = vsel %vm83, %v9564, 0
  %v9616 = vsel %vm83, %v9565, 0
  %v9618 = vsel %vm83, %v9566, 0
  %v9620 = vsel %vm83, %v9567, 0
  %v9622 = vsel %vm83, %v9568, 0
  %v9624 = vsel %vm83, %v9569, 0
  %v9626 = vsel %vm83, %v9570, 0
  %v9628 = vsel %vm83, %v9571, 0
  %v9630 = vsel %vm83, %v9572, 0
  %v9632 = vsel %vm83, %v9573, 0
  %v9634 = vsel %vm83, %v9574, 0
  %v9636 = vsel %vm83, %v9575, 0
  %v9638 = vsel %vm83, %v9576, 0
  %v9640 = vsel %vm83, %v9577, 0
  %v9642 = vsel %vm83, %v9578, 0
  %v9644 = vsel %vm83, %v9579, 0
  %v9646 = vsel %vm83, %v9580, 0
  %v9648 = vsel %vm83, %v9581, 0
  %v9650 = vsel %vm83, %v9582, 0
  %v9652 = vsel %vm83, %v9583, 0
  %v9654 = vsel %vm83, %v9584, 0
  %v9656 = vsel %vm83, %v9585, 0
  %v9658 = vsel %vm83, %v9586, 0
  %v9660 = vsel %vm83, %v9587, 0
  %v9662 = vsel %vm83, %v9588, 0
  %v9664 = vsel %vm83, %v9589, 0
  %v9666 = vsel %vm83, %v9590, 0
  %v9668 = vsel %vm83, %v9591, 0
  %v9670 = vsel %vm83, %v9592, 0
  %9672 = vmatprep.subr.mxu0 %v9598
  %9673 = vmatpush1.msra.mxu0 %v9596
  %9674 = vmatprep.subr.mxu0 0.0
  %9675 = vmatpush1.msra.mxu0 0.0
  %9676 = vmatprep.subr.mxu0 0.0
  %9677 = vmatpush1.msra.mxu0 0.0
  %9678 = vmatprep.subr.mxu0 0.0
  %9679 = vmatpush1.msra.mxu0 0.0
  %9680 = vmatprep.subr.mxu0 0.0
  %9681 = vmatpush1.msra.mxu0 0.0
  %9682 = vmatprep.subr.mxu0 0.0
  %9683 = vmatpush1.msra.mxu0 0.0
  %9684 = vmatprep.subr.mxu0 0.0
  %9685 = vmatpush1.msra.mxu0 0.0
  %9686 = vmatprep.subr.mxu0 0.0
  %9687 = vmatpush1.msra.mxu0 0.0
  %9688 = vmatprep.subr.mxu0 0.0
  %9689 = vmatpush1.msra.mxu0 0.0
  %9690 = vmatprep.subr.mxu0 0.0
  %9691 = vmatpush1.msra.mxu0 0.0
  %9692 = vmatprep.subr.mxu0 0.0
  %9693 = vmatpush1.msra.mxu0 0.0
  %9694 = vmatprep.subr.mxu0 0.0
  %9695 = vmatpush1.msra.mxu0 0.0
  %9696 = vmatprep.subr.mxu0 0.0
  %9697 = vmatpush1.msra.mxu0 0.0
  %9698 = vmatprep.subr.mxu0 0.0
  %9699 = vmatpush1.msra.mxu0 0.0
  %9700 = vmatprep.subr.mxu0 0.0
  %9701 = vmatpush1.msra.mxu0 0.0
  %9702 = vmatprep.subr.mxu0 0.0
  %9703 = vmatpush1.msra.mxu0 0.0
  %9704 = vmatprep.subr.mxu0 0.0
  %9705 = vmatpush1.msra.mxu0 0.0
  %9706 = vmatprep.subr.mxu0 0.0
  %9707 = vmatpush1.msra.mxu0 0.0
  %9708 = vmatprep.subr.mxu0 0.0
  %9709 = vmatpush1.msra.mxu0 0.0
  %9710 = vmatprep.subr.mxu0 0.0
  %9711 = vmatpush1.msra.mxu0 0.0
  %9712 = vmatprep.subr.mxu0 0.0
  %9713 = vmatpush1.msra.mxu0 0.0
  %9714 = vmatprep.subr.mxu0 0.0
  %9715 = vmatpush1.msra.mxu0 0.0
  %9716 = vmatprep.subr.mxu0 0.0
  %9717 = vmatpush1.msra.mxu0 0.0
  %9718 = vmatprep.subr.mxu0 0.0
  %9719 = vmatpush1.msra.mxu0 0.0
  %9720 = vmatprep.subr.mxu0 0.0
  %9721 = vmatpush1.msra.mxu0 0.0
  %9722 = vmatprep.subr.mxu0 0.0
  %9723 = vmatpush1.msra.mxu0 0.0
  %9724 = vmatprep.subr.mxu0 0.0
  %9725 = vmatpush1.msra.mxu0 0.0
  %9726 = vmatprep.subr.mxu0 0.0
  %9727 = vmatpush1.msra.mxu0 0.0
  %9728 = vmatprep.subr.mxu0 0.0
  %9729 = vmatpush1.msra.mxu0 0.0
  %9730 = vmatprep.subr.mxu0 0.0
  %9731 = vmatpush1.msra.mxu0 0.0
  %9732 = vmatprep.subr.mxu0 0.0
  %9733 = vmatpush1.msra.mxu0 0.0
  %9734 = vmatprep.subr.mxu0 0.0
  %9735 = vmatpush1.msra.mxu0 0.0
  %9736 = vmatprep.mubr.f32.mxu0 0.0
  %9737 = vmatmul.mubr.f32.gmra.mrb[0].mxu0 %v9594
  %v9738 = vpop.f32.mrb[0].mxu0
  %v9739 = vadd.f32 0.0, %v9738
  %v9740 = vpop.f32.mrb[0].mxu0
  %v9741 = vadd.f32 0.0, %v9740
  %9742 = vdwg.mxu0
  %9743 = vmatprep.subr.mxu0 %v9602
  %9744 = vmatpush1.msra.mxu0 %v9600
  %9745 = vmatprep.subr.mxu0 0.0
  %9746 = vmatpush1.msra.mxu0 0.0
  %9747 = vmatprep.subr.mxu0 0.0
  %9748 = vmatpush1.msra.mxu0 0.0
  %9749 = vmatprep.subr.mxu0 0.0
  %9750 = vmatpush1.msra.mxu0 0.0
  %9751 = vmatprep.subr.mxu0 0.0
  %9752 = vmatpush1.msra.mxu0 0.0
  %9753 = vmatprep.subr.mxu0 0.0
  %9754 = vmatpush1.msra.mxu0 0.0
  %9755 = vmatprep.subr.mxu0 0.0
  %9756 = vmatpush1.msra.mxu0 0.0
  %9757 = vmatprep.subr.mxu0 0.0
  %9758 = vmatpush1.msra.mxu0 0.0
  %9759 = vmatprep.subr.mxu0 0.0
  %9760 = vmatpush1.msra.mxu0 0.0
  %9761 = vmatprep.subr.mxu0 0.0
  %9762 = vmatpush1.msra.mxu0 0.0
  %9763 = vmatprep.subr.mxu0 0.0
  %9764 = vmatpush1.msra.mxu0 0.0
  %9765 = vmatprep.subr.mxu0 0.0
  %9766 = vmatpush1.msra.mxu0 0.0
  %9767 = vmatprep.subr.mxu0 0.0
  %9768 = vmatpush1.msra.mxu0 0.0
  %9769 = vmatprep.subr.mxu0 0.0
  %9770 = vmatpush1.msra.mxu0 0.0
  %9771 = vmatprep.subr.mxu0 0.0
  %9772 = vmatpush1.msra.mxu0 0.0
  %9773 = vmatprep.subr.mxu0 0.0
  %9774 = vmatpush1.msra.mxu0 0.0
  %9775 = vmatprep.subr.mxu0 0.0
  %9776 = vmatpush1.msra.mxu0 0.0
  %9777 = vmatprep.subr.mxu0 0.0
  %9778 = vmatpush1.msra.mxu0 0.0
  %9779 = vmatprep.subr.mxu0 0.0
  %9780 = vmatpush1.msra.mxu0 0.0
  %9781 = vmatprep.subr.mxu0 0.0
  %9782 = vmatpush1.msra.mxu0 0.0
  %9783 = vmatprep.subr.mxu0 0.0
  %9784 = vmatpush1.msra.mxu0 0.0
  %9785 = vmatprep.subr.mxu0 0.0
  %9786 = vmatpush1.msra.mxu0 0.0
  %9787 = vmatprep.subr.mxu0 0.0
  %9788 = vmatpush1.msra.mxu0 0.0
  %9789 = vmatprep.subr.mxu0 0.0
  %9790 = vmatpush1.msra.mxu0 0.0
  %9791 = vmatprep.subr.mxu0 0.0
  %9792 = vmatpush1.msra.mxu0 0.0
  %9793 = vmatprep.subr.mxu0 0.0
  %9794 = vmatpush1.msra.mxu0 0.0
  %9795 = vmatprep.subr.mxu0 0.0
  %9796 = vmatpush1.msra.mxu0 0.0
  %9797 = vmatprep.subr.mxu0 0.0
  %9798 = vmatpush1.msra.mxu0 0.0
  %9799 = vmatprep.subr.mxu0 0.0
  %9800 = vmatpush1.msra.mxu0 0.0
  %9801 = vmatprep.subr.mxu0 0.0
  %9802 = vmatpush1.msra.mxu0 0.0
  %9803 = vmatprep.subr.mxu0 0.0
  %9804 = vmatpush1.msra.mxu0 0.0
  %9805 = vmatprep.subr.mxu0 0.0
  %9806 = vmatpush1.msra.mxu0 0.0
  %9807 = vmatprep.mubr.f32.mxu0 0.0
  %9808 = vmatmul.mubr.f32.gmra.mrb[0].mxu0 %v9594
  %v9809 = vpop.f32.mrb[0].mxu0
  %v9810 = vadd.f32 0.0, %v9809
  %v9811 = vpop.f32.mrb[0].mxu0
  %v9812 = vadd.f32 0.0, %v9811
  %9813 = vdwg.mxu0
  %9814 = vmatprep.subr.mxu0 %v9606
  %9815 = vmatpush1.msra.mxu0 %v9604
  %9816 = vmatprep.subr.mxu0 0.0
  %9817 = vmatpush1.msra.mxu0 0.0
  %9818 = vmatprep.subr.mxu0 0.0
  %9819 = vmatpush1.msra.mxu0 0.0
  %9820 = vmatprep.subr.mxu0 0.0
  %9821 = vmatpush1.msra.mxu0 0.0
  %9822 = vmatprep.subr.mxu0 0.0
  %9823 = vmatpush1.msra.mxu0 0.0
  %9824 = vmatprep.subr.mxu0 0.0
  %9825 = vmatpush1.msra.mxu0 0.0
  %9826 = vmatprep.subr.mxu0 0.0
  %9827 = vmatpush1.msra.mxu0 0.0
  %9828 = vmatprep.subr.mxu0 0.0
  %9829 = vmatpush1.msra.mxu0 0.0
  %9830 = vmatprep.subr.mxu0 0.0
  %9831 = vmatpush1.msra.mxu0 0.0
  %9832 = vmatprep.subr.mxu0 0.0
  %9833 = vmatpush1.msra.mxu0 0.0
  %9834 = vmatprep.subr.mxu0 0.0
  %9835 = vmatpush1.msra.mxu0 0.0
  %9836 = vmatprep.subr.mxu0 0.0
  %9837 = vmatpush1.msra.mxu0 0.0
  %9838 = vmatprep.subr.mxu0 0.0
  %9839 = vmatpush1.msra.mxu0 0.0
  %9840 = vmatprep.subr.mxu0 0.0
  %9841 = vmatpush1.msra.mxu0 0.0
  %9842 = vmatprep.subr.mxu0 0.0
  %9843 = vmatpush1.msra.mxu0 0.0
  %9844 = vmatprep.subr.mxu0 0.0
  %9845 = vmatpush1.msra.mxu0 0.0
  %9846 = vmatprep.subr.mxu0 0.0
  %9847 = vmatpush1.msra.mxu0 0.0
  %9848 = vmatprep.subr.mxu0 0.0
  %9849 = vmatpush1.msra.mxu0 0.0
  %9850 = vmatprep.subr.mxu0 0.0
  %9851 = vmatpush1.msra.mxu0 0.0
  %9852 = vmatprep.subr.mxu0 0.0
  %9853 = vmatpush1.msra.mxu0 0.0
  %9854 = vmatprep.subr.mxu0 0.0
  %9855 = vmatpush1.msra.mxu0 0.0
  %9856 = vmatprep.subr.mxu0 0.0
  %9857 = vmatpush1.msra.mxu0 0.0
  %9858 = vmatprep.subr.mxu0 0.0
  %9859 = vmatpush1.msra.mxu0 0.0
  %9860 = vmatprep.subr.mxu0 0.0
  %9861 = vmatpush1.msra.mxu0 0.0
  %9862 = vmatprep.subr.mxu0 0.0
  %9863 = vmatpush1.msra.mxu0 0.0
  %9864 = vmatprep.subr.mxu0 0.0
  %9865 = vmatpush1.msra.mxu0 0.0
  %9866 = vmatprep.subr.mxu0 0.0
  %9867 = vmatpush1.msra.mxu0 0.0
  %9868 = vmatprep.subr.mxu0 0.0
  %9869 = vmatpush1.msra.mxu0 0.0
  %9870 = vmatprep.subr.mxu0 0.0
  %9871 = vmatpush1.msra.mxu0 0.0
  %9872 = vmatprep.subr.mxu0 0.0
  %9873 = vmatpush1.msra.mxu0 0.0
  %9874 = vmatprep.subr.mxu0 0.0
  %9875 = vmatpush1.msra.mxu0 0.0
  %9876 = vmatprep.subr.mxu0 0.0
  %9877 = vmatpush1.msra.mxu0 0.0
  %9878 = vmatprep.mubr.f32.mxu0 0.0
  %9879 = vmatmul.mubr.f32.gmra.mrb[0].mxu0 %v9594
  %v9880 = vpop.f32.mrb[0].mxu0
  %v9881 = vadd.f32 0.0, %v9880
  %v9882 = vpop.f32.mrb[0].mxu0
  %v9883 = vadd.f32 0.0, %v9882
  %9884 = vdwg.mxu0
  %9885 = vmatprep.subr.mxu0 %v9610
  %9886 = vmatpush1.msra.mxu0 %v9608
  %9887 = vmatprep.subr.mxu0 0.0
  %9888 = vmatpush1.msra.mxu0 0.0
  %9889 = vmatprep.subr.mxu0 0.0
  %9890 = vmatpush1.msra.mxu0 0.0
  %9891 = vmatprep.subr.mxu0 0.0
  %9892 = vmatpush1.msra.mxu0 0.0
  %9893 = vmatprep.subr.mxu0 0.0
  %9894 = vmatpush1.msra.mxu0 0.0
  %9895 = vmatprep.subr.mxu0 0.0
  %9896 = vmatpush1.msra.mxu0 0.0
  %9897 = vmatprep.subr.mxu0 0.0
  %9898 = vmatpush1.msra.mxu0 0.0
  %9899 = vmatprep.subr.mxu0 0.0
  %9900 = vmatpush1.msra.mxu0 0.0
  %9901 = vmatprep.subr.mxu0 0.0
  %9902 = vmatpush1.msra.mxu0 0.0
  %9903 = vmatprep.subr.mxu0 0.0
  %9904 = vmatpush1.msra.mxu0 0.0
  %9905 = vmatprep.subr.mxu0 0.0
  %9906 = vmatpush1.msra.mxu0 0.0
  %9907 = vmatprep.subr.mxu0 0.0
  %9908 = vmatpush1.msra.mxu0 0.0
  %9909 = vmatprep.subr.mxu0 0.0
  %9910 = vmatpush1.msra.mxu0 0.0
  %9911 = vmatprep.subr.mxu0 0.0
  %9912 = vmatpush1.msra.mxu0 0.0
  %9913 = vmatprep.subr.mxu0 0.0
  %9914 = vmatpush1.msra.mxu0 0.0
  %9915 = vmatprep.subr.mxu0 0.0
  %9916 = vmatpush1.msra.mxu0 0.0
  %9917 = vmatprep.subr.mxu0 0.0
  %9918 = vmatpush1.msra.mxu0 0.0
  %9919 = vmatprep.subr.mxu0 0.0
  %9920 = vmatpush1.msra.mxu0 0.0
  %9921 = vmatprep.subr.mxu0 0.0
  %9922 = vmatpush1.msra.mxu0 0.0
  %9923 = vmatprep.subr.mxu0 0.0
  %9924 = vmatpush1.msra.mxu0 0.0
  %9925 = vmatprep.subr.mxu0 0.0
  %9926 = vmatpush1.msra.mxu0 0.0
  %9927 = vmatprep.subr.mxu0 0.0
  %9928 = vmatpush1.msra.mxu0 0.0
  %9929 = vmatprep.subr.mxu0 0.0
  %9930 = vmatpush1.msra.mxu0 0.0
  %9931 = vmatprep.subr.mxu0 0.0
  %9932 = vmatpush1.msra.mxu0 0.0
  %9933 = vmatprep.subr.mxu0 0.0
  %9934 = vmatpush1.msra.mxu0 0.0
  %9935 = vmatprep.subr.mxu0 0.0
  %9936 = vmatpush1.msra.mxu0 0.0
  %9937 = vmatprep.subr.mxu0 0.0
  %9938 = vmatpush1.msra.mxu0 0.0
  %9939 = vmatprep.subr.mxu0 0.0
  %9940 = vmatpush1.msra.mxu0 0.0
  %9941 = vmatprep.subr.mxu0 0.0
  %9942 = vmatpush1.msra.mxu0 0.0
  %9943 = vmatprep.subr.mxu0 0.0
  %9944 = vmatpush1.msra.mxu0 0.0
  %9945 = vmatprep.subr.mxu0 0.0
  %9946 = vmatpush1.msra.mxu0 0.0
  %9947 = vmatprep.subr.mxu0 0.0
  %9948 = vmatpush1.msra.mxu0 0.0
  %9949 = vmatprep.mubr.f32.mxu0 0.0
  %9950 = vmatmul.mubr.f32.gmra.mrb[0].mxu0 %v9594
  %v9951 = vpop.f32.mrb[0].mxu0
  %v9952 = vadd.f32 0.0, %v9951
  %v9953 = vpop.f32.mrb[0].mxu0
  %v9954 = vadd.f32 0.0, %v9953
  %9955 = vdwg.mxu0
  %9956 = vmatprep.subr.mxu0 %v9614
  %9957 = vmatpush1.msra.mxu0 %v9612
  %9958 = vmatprep.subr.mxu0 0.0
  %9959 = vmatpush1.msra.mxu0 0.0
  %9960 = vmatprep.subr.mxu0 0.0
  %9961 = vmatpush1.msra.mxu0 0.0
  %9962 = vmatprep.subr.mxu0 0.0
  %9963 = vmatpush1.msra.mxu0 0.0
  %9964 = vmatprep.subr.mxu0 0.0
  %9965 = vmatpush1.msra.mxu0 0.0
  %9966 = vmatprep.subr.mxu0 0.0
  %9967 = vmatpush1.msra.mxu0 0.0
  %9968 = vmatprep.subr.mxu0 0.0
  %9969 = vmatpush1.msra.mxu0 0.0
  %9970 = vmatprep.subr.mxu0 0.0
  %9971 = vmatpush1.msra.mxu0 0.0
  %9972 = vmatprep.subr.mxu0 0.0
  %9973 = vmatpush1.msra.mxu0 0.0
  %9974 = vmatprep.subr.mxu0 0.0
  %9975 = vmatpush1.msra.mxu0 0.0
  %9976 = vmatprep.subr.mxu0 0.0
  %9977 = vmatpush1.msra.mxu0 0.0
  %9978 = vmatprep.subr.mxu0 0.0
  %9979 = vmatpush1.msra.mxu0 0.0
  %9980 = vmatprep.subr.mxu0 0.0
  %9981 = vmatpush1.msra.mxu0 0.0
  %9982 = vmatprep.subr.mxu0 0.0
  %9983 = vmatpush1.msra.mxu0 0.0
  %9984 = vmatprep.subr.mxu0 0.0
  %9985 = vmatpush1.msra.mxu0 0.0
  %9986 = vmatprep.subr.mxu0 0.0
  %9987 = vmatpush1.msra.mxu0 0.0
  %9988 = vmatprep.subr.mxu0 0.0
  %9989 = vmatpush1.msra.mxu0 0.0
  %9990 = vmatprep.subr.mxu0 0.0
  %9991 = vmatpush1.msra.mxu0 0.0
  %9992 = vmatprep.subr.mxu0 0.0
  %9993 = vmatpush1.msra.mxu0 0.0
  %9994 = vmatprep.subr.mxu0 0.0
  %9995 = vmatpush1.msra.mxu0 0.0
  %9996 = vmatprep.subr.mxu0 0.0
  %9997 = vmatpush1.msra.mxu0 0.0
  %9998 = vmatprep.subr.mxu0 0.0
  %9999 = vmatpush1.msra.mxu0 0.0
  %10000 = vmatprep.subr.mxu0 0.0
  %10001 = vmatpush1.msra.mxu0 0.0
  %10002 = vmatprep.subr.mxu0 0.0
  %10003 = vmatpush1.msra.mxu0 0.0
  %10004 = vmatprep.subr.mxu0 0.0
  %10005 = vmatpush1.msra.mxu0 0.0
  %10006 = vmatprep.subr.mxu0 0.0
  %10007 = vmatpush1.msra.mxu0 0.0
  %10008 = vmatprep.subr.mxu0 0.0
  %10009 = vmatpush1.msra.mxu0 0.0
  %10010 = vmatprep.subr.mxu0 0.0
  %10011 = vmatpush1.msra.mxu0 0.0
  %10012 = vmatprep.subr.mxu0 0.0
  %10013 = vmatpush1.msra.mxu0 0.0
  %10014 = vmatprep.subr.mxu0 0.0
  %10015 = vmatpush1.msra.mxu0 0.0
  %10016 = vmatprep.subr.mxu0 0.0
  %10017 = vmatpush1.msra.mxu0 0.0
  %10018 = vmatprep.subr.mxu0 0.0
  %10019 = vmatpush1.msra.mxu0 0.0
  %10020 = vmatprep.mubr.f32.mxu0 0.0
  %10021 = vmatmul.mubr.f32.gmra.mrb[0].mxu0 %v9594
  %v10022 = vpop.f32.mrb[0].mxu0
  %v10023 = vadd.f32 0.0, %v10022
  %v10024 = vpop.f32.mrb[0].mxu0
  %v10025 = vadd.f32 0.0, %v10024
  %10026 = vdwg.mxu0
  %10027 = vmatprep.subr.mxu0 %v9618
  %10028 = vmatpush1.msra.mxu0 %v9616
  %10029 = vmatprep.subr.mxu0 0.0
  %10030 = vmatpush1.msra.mxu0 0.0
  %10031 = vmatprep.subr.mxu0 0.0
  %10032 = vmatpush1.msra.mxu0 0.0
  %10033 = vmatprep.subr.mxu0 0.0
  %10034 = vmatpush1.msra.mxu0 0.0
  %10035 = vmatprep.subr.mxu0 0.0
  %10036 = vmatpush1.msra.mxu0 0.0
  %10037 = vmatprep.subr.mxu0 0.0
  %10038 = vmatpush1.msra.mxu0 0.0
  %10039 = vmatprep.subr.mxu0 0.0
  %10040 = vmatpush1.msra.mxu0 0.0
  %10041 = vmatprep.subr.mxu0 0.0
  %10042 = vmatpush1.msra.mxu0 0.0
  %10043 = vmatprep.subr.mxu0 0.0
  %10044 = vmatpush1.msra.mxu0 0.0
  %10045 = vmatprep.subr.mxu0 0.0
  %10046 = vmatpush1.msra.mxu0 0.0
  %10047 = vmatprep.subr.mxu0 0.0
  %10048 = vmatpush1.msra.mxu0 0.0
  %10049 = vmatprep.subr.mxu0 0.0
  %10050 = vmatpush1.msra.mxu0 0.0
  %10051 = vmatprep.subr.mxu0 0.0
  %10052 = vmatpush1.msra.mxu0 0.0
  %10053 = vmatprep.subr.mxu0 0.0
  %10054 = vmatpush1.msra.mxu0 0.0
  %10055 = vmatprep.subr.mxu0 0.0
  %10056 = vmatpush1.msra.mxu0 0.0
  %10057 = vmatprep.subr.mxu0 0.0
  %10058 = vmatpush1.msra.mxu0 0.0
  %10059 = vmatprep.subr.mxu0 0.0
  %10060 = vmatpush1.msra.mxu0 0.0
  %10061 = vmatprep.subr.mxu0 0.0
  %10062 = vmatpush1.msra.mxu0 0.0
  %10063 = vmatprep.subr.mxu0 0.0
  %10064 = vmatpush1.msra.mxu0 0.0
  %10065 = vmatprep.subr.mxu0 0.0
  %10066 = vmatpush1.msra.mxu0 0.0
  %10067 = vmatprep.subr.mxu0 0.0
  %10068 = vmatpush1.msra.mxu0 0.0
  %10069 = vmatprep.subr.mxu0 0.0
  %10070 = vmatpush1.msra.mxu0 0.0
  %10071 = vmatprep.subr.mxu0 0.0
  %10072 = vmatpush1.msra.mxu0 0.0
  %10073 = vmatprep.subr.mxu0 0.0
  %10074 = vmatpush1.msra.mxu0 0.0
  %10075 = vmatprep.subr.mxu0 0.0
  %10076 = vmatpush1.msra.mxu0 0.0
  %10077 = vmatprep.subr.mxu0 0.0
  %10078 = vmatpush1.msra.mxu0 0.0
  %10079 = vmatprep.subr.mxu0 0.0
  %10080 = vmatpush1.msra.mxu0 0.0
  %10081 = vmatprep.subr.mxu0 0.0
  %10082 = vmatpush1.msra.mxu0 0.0
  %10083 = vmatprep.subr.mxu0 0.0
  %10084 = vmatpush1.msra.mxu0 0.0
  %10085 = vmatprep.subr.mxu0 0.0
  %10086 = vmatpush1.msra.mxu0 0.0
  %10087 = vmatprep.subr.mxu0 0.0
  %10088 = vmatpush1.msra.mxu0 0.0
  %10089 = vmatprep.subr.mxu0 0.0
  %10090 = vmatpush1.msra.mxu0 0.0
  %10091 = vmatprep.mubr.f32.mxu0 0.0
  %10092 = vmatmul.mubr.f32.gmra.mrb[0].mxu0 %v9594
  %v10093 = vpop.f32.mrb[0].mxu0
  %v10094 = vadd.f32 0.0, %v10093
  %v10095 = vpop.f32.mrb[0].mxu0
  %v10096 = vadd.f32 0.0, %v10095
  %10097 = vdwg.mxu0
  %10098 = vmatprep.subr.mxu0 %v9622
  %10099 = vmatpush1.msra.mxu0 %v9620
  %10100 = vmatprep.subr.mxu0 0.0
  %10101 = vmatpush1.msra.mxu0 0.0
  %10102 = vmatprep.subr.mxu0 0.0
  %10103 = vmatpush1.msra.mxu0 0.0
  %10104 = vmatprep.subr.mxu0 0.0
  %10105 = vmatpush1.msra.mxu0 0.0
  %10106 = vmatprep.subr.mxu0 0.0
  %10107 = vmatpush1.msra.mxu0 0.0
  %10108 = vmatprep.subr.mxu0 0.0
  %10109 = vmatpush1.msra.mxu0 0.0
  %10110 = vmatprep.subr.mxu0 0.0
  %10111 = vmatpush1.msra.mxu0 0.0
  %10112 = vmatprep.subr.mxu0 0.0
  %10113 = vmatpush1.msra.mxu0 0.0
  %10114 = vmatprep.subr.mxu0 0.0
  %10115 = vmatpush1.msra.mxu0 0.0
  %10116 = vmatprep.subr.mxu0 0.0
  %10117 = vmatpush1.msra.mxu0 0.0
  %10118 = vmatprep.subr.mxu0 0.0
  %10119 = vmatpush1.msra.mxu0 0.0
  %10120 = vmatprep.subr.mxu0 0.0
  %10121 = vmatpush1.msra.mxu0 0.0
  %10122 = vmatprep.subr.mxu0 0.0
  %10123 = vmatpush1.msra.mxu0 0.0
  %10124 = vmatprep.subr.mxu0 0.0
  %10125 = vmatpush1.msra.mxu0 0.0
  %10126 = vmatprep.subr.mxu0 0.0
  %10127 = vmatpush1.msra.mxu0 0.0
  %10128 = vmatprep.subr.mxu0 0.0
  %10129 = vmatpush1.msra.mxu0 0.0
  %10130 = vmatprep.subr.mxu0 0.0
  %10131 = vmatpush1.msra.mxu0 0.0
  %10132 = vmatprep.subr.mxu0 0.0
  %10133 = vmatpush1.msra.mxu0 0.0
  %10134 = vmatprep.subr.mxu0 0.0
  %10135 = vmatpush1.msra.mxu0 0.0
  %10136 = vmatprep.subr.mxu0 0.0
  %10137 = vmatpush1.msra.mxu0 0.0
  %10138 = vmatprep.subr.mxu0 0.0
  %10139 = vmatpush1.msra.mxu0 0.0
  %10140 = vmatprep.subr.mxu0 0.0
  %10141 = vmatpush1.msra.mxu0 0.0
  %10142 = vmatprep.subr.mxu0 0.0
  %10143 = vmatpush1.msra.mxu0 0.0
  %10144 = vmatprep.subr.mxu0 0.0
  %10145 = vmatpush1.msra.mxu0 0.0
  %10146 = vmatprep.subr.mxu0 0.0
  %10147 = vmatpush1.msra.mxu0 0.0
  %10148 = vmatprep.subr.mxu0 0.0
  %10149 = vmatpush1.msra.mxu0 0.0
  %10150 = vmatprep.subr.mxu0 0.0
  %10151 = vmatpush1.msra.mxu0 0.0
  %10152 = vmatprep.subr.mxu0 0.0
  %10153 = vmatpush1.msra.mxu0 0.0
  %10154 = vmatprep.subr.mxu0 0.0
  %10155 = vmatpush1.msra.mxu0 0.0
  %10156 = vmatprep.subr.mxu0 0.0
  %10157 = vmatpush1.msra.mxu0 0.0
  %10158 = vmatprep.subr.mxu0 0.0
  %10159 = vmatpush1.msra.mxu0 0.0
  %10160 = vmatprep.subr.mxu0 0.0
  %10161 = vmatpush1.msra.mxu0 0.0
  %10162 = vmatprep.mubr.f32.mxu0 0.0
  %10163 = vmatmul.mubr.f32.gmra.mrb[0].mxu0 %v9594
  %v10164 = vpop.f32.mrb[0].mxu0
  %v10165 = vadd.f32 0.0, %v10164
  %v10166 = vpop.f32.mrb[0].mxu0
  %v10167 = vadd.f32 0.0, %v10166
  %10168 = vdwg.mxu0
  %10169 = vmatprep.subr.mxu0 %v9626
  %10170 = vmatpush1.msra.mxu0 %v9624
  %10171 = vmatprep.subr.mxu0 0.0
  %10172 = vmatpush1.msra.mxu0 0.0
  %10173 = vmatprep.subr.mxu0 0.0
  %10174 = vmatpush1.msra.mxu0 0.0
  %10175 = vmatprep.subr.mxu0 0.0
  %10176 = vmatpush1.msra.mxu0 0.0
  %10177 = vmatprep.subr.mxu0 0.0
  %10178 = vmatpush1.msra.mxu0 0.0
  %10179 = vmatprep.subr.mxu0 0.0
  %10180 = vmatpush1.msra.mxu0 0.0
  %10181 = vmatprep.subr.mxu0 0.0
  %10182 = vmatpush1.msra.mxu0 0.0
  %10183 = vmatprep.subr.mxu0 0.0
  %10184 = vmatpush1.msra.mxu0 0.0
  %10185 = vmatprep.subr.mxu0 0.0
  %10186 = vmatpush1.msra.mxu0 0.0
  %10187 = vmatprep.subr.mxu0 0.0
  %10188 = vmatpush1.msra.mxu0 0.0
  %10189 = vmatprep.subr.mxu0 0.0
  %10190 = vmatpush1.msra.mxu0 0.0
  %10191 = vmatprep.subr.mxu0 0.0
  %10192 = vmatpush1.msra.mxu0 0.0
  %10193 = vmatprep.subr.mxu0 0.0
  %10194 = vmatpush1.msra.mxu0 0.0
  %10195 = vmatprep.subr.mxu0 0.0
  %10196 = vmatpush1.msra.mxu0 0.0
  %10197 = vmatprep.subr.mxu0 0.0
  %10198 = vmatpush1.msra.mxu0 0.0
  %10199 = vmatprep.subr.mxu0 0.0
  %10200 = vmatpush1.msra.mxu0 0.0
  %10201 = vmatprep.subr.mxu0 0.0
  %10202 = vmatpush1.msra.mxu0 0.0
  %10203 = vmatprep.subr.mxu0 0.0
  %10204 = vmatpush1.msra.mxu0 0.0
  %10205 = vmatprep.subr.mxu0 0.0
  %10206 = vmatpush1.msra.mxu0 0.0
  %10207 = vmatprep.subr.mxu0 0.0
  %10208 = vmatpush1.msra.mxu0 0.0
  %10209 = vmatprep.subr.mxu0 0.0
  %10210 = vmatpush1.msra.mxu0 0.0
  %10211 = vmatprep.subr.mxu0 0.0
  %10212 = vmatpush1.msra.mxu0 0.0
  %10213 = vmatprep.subr.mxu0 0.0
  %10214 = vmatpush1.msra.mxu0 0.0
  %10215 = vmatprep.subr.mxu0 0.0
  %10216 = vmatpush1.msra.mxu0 0.0
  %10217 = vmatprep.subr.mxu0 0.0
  %10218 = vmatpush1.msra.mxu0 0.0
  %10219 = vmatprep.subr.mxu0 0.0
  %10220 = vmatpush1.msra.mxu0 0.0
  %10221 = vmatprep.subr.mxu0 0.0
  %10222 = vmatpush1.msra.mxu0 0.0
  %10223 = vmatprep.subr.mxu0 0.0
  %10224 = vmatpush1.msra.mxu0 0.0
  %10225 = vmatprep.subr.mxu0 0.0
  %10226 = vmatpush1.msra.mxu0 0.0
  %10227 = vmatprep.subr.mxu0 0.0
  %10228 = vmatpush1.msra.mxu0 0.0
  %10229 = vmatprep.subr.mxu0 0.0
  %10230 = vmatpush1.msra.mxu0 0.0
  %10231 = vmatprep.subr.mxu0 0.0
  %10232 = vmatpush1.msra.mxu0 0.0
  %10233 = vmatprep.mubr.f32.mxu0 0.0
  %10234 = vmatmul.mubr.f32.gmra.mrb[0].mxu0 %v9594
  %v10235 = vpop.f32.mrb[0].mxu0
  %v10236 = vadd.f32 0.0, %v10235
  %v10237 = vpop.f32.mrb[0].mxu0
  %v10238 = vadd.f32 0.0, %v10237
  %10239 = vdwg.mxu0
  %10240 = vmatprep.subr.mxu0 %v9630
  %10241 = vmatpush1.msra.mxu0 %v9628
  %10242 = vmatprep.subr.mxu0 0.0
  %10243 = vmatpush1.msra.mxu0 0.0
  %10244 = vmatprep.subr.mxu0 0.0
  %10245 = vmatpush1.msra.mxu0 0.0
  %10246 = vmatprep.subr.mxu0 0.0
  %10247 = vmatpush1.msra.mxu0 0.0
  %10248 = vmatprep.subr.mxu0 0.0
  %10249 = vmatpush1.msra.mxu0 0.0
  %10250 = vmatprep.subr.mxu0 0.0
  %10251 = vmatpush1.msra.mxu0 0.0
  %10252 = vmatprep.subr.mxu0 0.0
  %10253 = vmatpush1.msra.mxu0 0.0
  %10254 = vmatprep.subr.mxu0 0.0
  %10255 = vmatpush1.msra.mxu0 0.0
  %10256 = vmatprep.subr.mxu0 0.0
  %10257 = vmatpush1.msra.mxu0 0.0
  %10258 = vmatprep.subr.mxu0 0.0
  %10259 = vmatpush1.msra.mxu0 0.0
  %10260 = vmatprep.subr.mxu0 0.0
  %10261 = vmatpush1.msra.mxu0 0.0
  %10262 = vmatprep.subr.mxu0 0.0
  %10263 = vmatpush1.msra.mxu0 0.0
  %10264 = vmatprep.subr.mxu0 0.0
  %10265 = vmatpush1.msra.mxu0 0.0
  %10266 = vmatprep.subr.mxu0 0.0
  %10267 = vmatpush1.msra.mxu0 0.0
  %10268 = vmatprep.subr.mxu0 0.0
  %10269 = vmatpush1.msra.mxu0 0.0
  %10270 = vmatprep.subr.mxu0 0.0
  %10271 = vmatpush1.msra.mxu0 0.0
  %10272 = vmatprep.subr.mxu0 0.0
  %10273 = vmatpush1.msra.mxu0 0.0
  %10274 = vmatprep.subr.mxu0 0.0
  %10275 = vmatpush1.msra.mxu0 0.0
  %10276 = vmatprep.subr.mxu0 0.0
  %10277 = vmatpush1.msra.mxu0 0.0
  %10278 = vmatprep.subr.mxu0 0.0
  %10279 = vmatpush1.msra.mxu0 0.0
  %10280 = vmatprep.subr.mxu0 0.0
  %10281 = vmatpush1.msra.mxu0 0.0
  %10282 = vmatprep.subr.mxu0 0.0
  %10283 = vmatpush1.msra.mxu0 0.0
  %10284 = vmatprep.subr.mxu0 0.0
  %10285 = vmatpush1.msra.mxu0 0.0
  %10286 = vmatprep.subr.mxu0 0.0
  %10287 = vmatpush1.msra.mxu0 0.0
  %10288 = vmatprep.subr.mxu0 0.0
  %10289 = vmatpush1.msra.mxu0 0.0
  %10290 = vmatprep.subr.mxu0 0.0
  %10291 = vmatpush1.msra.mxu0 0.0
  %10292 = vmatprep.subr.mxu0 0.0
  %10293 = vmatpush1.msra.mxu0 0.0
  %10294 = vmatprep.subr.mxu0 0.0
  %10295 = vmatpush1.msra.mxu0 0.0
  %10296 = vmatprep.subr.mxu0 0.0
  %10297 = vmatpush1.msra.mxu0 0.0
  %10298 = vmatprep.subr.mxu0 0.0
  %10299 = vmatpush1.msra.mxu0 0.0
  %10300 = vmatprep.subr.mxu0 0.0
  %10301 = vmatpush1.msra.mxu0 0.0
  %10302 = vmatprep.subr.mxu0 0.0
  %10303 = vmatpush1.msra.mxu0 0.0
  %10304 = vmatprep.mubr.f32.mxu0 0.0
  %10305 = vmatmul.mubr.f32.gmra.mrb[0].mxu0 %v9594
  %v10306 = vpop.f32.mrb[0].mxu0
  %v10307 = vadd.f32 0.0, %v10306
  %v10308 = vpop.f32.mrb[0].mxu0
  %v10309 = vadd.f32 0.0, %v10308
  %10310 = vdwg.mxu0
  %10311 = vmatprep.subr.mxu0 %v9634
  %10312 = vmatpush1.msra.mxu0 %v9632
  %10313 = vmatprep.subr.mxu0 0.0
  %10314 = vmatpush1.msra.mxu0 0.0
  %10315 = vmatprep.subr.mxu0 0.0
  %10316 = vmatpush1.msra.mxu0 0.0
  %10317 = vmatprep.subr.mxu0 0.0
  %10318 = vmatpush1.msra.mxu0 0.0
  %10319 = vmatprep.subr.mxu0 0.0
  %10320 = vmatpush1.msra.mxu0 0.0
  %10321 = vmatprep.subr.mxu0 0.0
  %10322 = vmatpush1.msra.mxu0 0.0
  %10323 = vmatprep.subr.mxu0 0.0
  %10324 = vmatpush1.msra.mxu0 0.0
  %10325 = vmatprep.subr.mxu0 0.0
  %10326 = vmatpush1.msra.mxu0 0.0
  %10327 = vmatprep.subr.mxu0 0.0
  %10328 = vmatpush1.msra.mxu0 0.0
  %10329 = vmatprep.subr.mxu0 0.0
  %10330 = vmatpush1.msra.mxu0 0.0
  %10331 = vmatprep.subr.mxu0 0.0
  %10332 = vmatpush1.msra.mxu0 0.0
  %10333 = vmatprep.subr.mxu0 0.0
  %10334 = vmatpush1.msra.mxu0 0.0
  %10335 = vmatprep.subr.mxu0 0.0
  %10336 = vmatpush1.msra.mxu0 0.0
  %10337 = vmatprep.subr.mxu0 0.0
  %10338 = vmatpush1.msra.mxu0 0.0
  %10339 = vmatprep.subr.mxu0 0.0
  %10340 = vmatpush1.msra.mxu0 0.0
  %10341 = vmatprep.subr.mxu0 0.0
  %10342 = vmatpush1.msra.mxu0 0.0
  %10343 = vmatprep.subr.mxu0 0.0
  %10344 = vmatpush1.msra.mxu0 0.0
  %10345 = vmatprep.subr.mxu0 0.0
  %10346 = vmatpush1.msra.mxu0 0.0
  %10347 = vmatprep.subr.mxu0 0.0
  %10348 = vmatpush1.msra.mxu0 0.0
  %10349 = vmatprep.subr.mxu0 0.0
  %10350 = vmatpush1.msra.mxu0 0.0
  %10351 = vmatprep.subr.mxu0 0.0
  %10352 = vmatpush1.msra.mxu0 0.0
  %10353 = vmatprep.subr.mxu0 0.0
  %10354 = vmatpush1.msra.mxu0 0.0
  %10355 = vmatprep.subr.mxu0 0.0
  %10356 = vmatpush1.msra.mxu0 0.0
  %10357 = vmatprep.subr.mxu0 0.0
  %10358 = vmatpush1.msra.mxu0 0.0
  %10359 = vmatprep.subr.mxu0 0.0
  %10360 = vmatpush1.msra.mxu0 0.0
  %10361 = vmatprep.subr.mxu0 0.0
  %10362 = vmatpush1.msra.mxu0 0.0
  %10363 = vmatprep.subr.mxu0 0.0
  %10364 = vmatpush1.msra.mxu0 0.0
  %10365 = vmatprep.subr.mxu0 0.0
  %10366 = vmatpush1.msra.mxu0 0.0
  %10367 = vmatprep.subr.mxu0 0.0
  %10368 = vmatpush1.msra.mxu0 0.0
  %10369 = vmatprep.subr.mxu0 0.0
  %10370 = vmatpush1.msra.mxu0 0.0
  %10371 = vmatprep.subr.mxu0 0.0
  %10372 = vmatpush1.msra.mxu0 0.0
  %10373 = vmatprep.subr.mxu0 0.0
  %10374 = vmatpush1.msra.mxu0 0.0
  %10375 = vmatprep.mubr.f32.mxu0 0.0
  %10376 = vmatmul.mubr.f32.gmra.mrb[0].mxu0 %v9594
  %v10377 = vpop.f32.mrb[0].mxu0
  %v10378 = vadd.f32 0.0, %v10377
  %v10379 = vpop.f32.mrb[0].mxu0
  %v10380 = vadd.f32 0.0, %v10379
  %10381 = vdwg.mxu0
  %10382 = vmatprep.subr.mxu0 %v9638
  %10383 = vmatpush1.msra.mxu0 %v9636
  %10384 = vmatprep.subr.mxu0 0.0
  %10385 = vmatpush1.msra.mxu0 0.0
  %10386 = vmatprep.subr.mxu0 0.0
  %10387 = vmatpush1.msra.mxu0 0.0
  %10388 = vmatprep.subr.mxu0 0.0
  %10389 = vmatpush1.msra.mxu0 0.0
  %10390 = vmatprep.subr.mxu0 0.0
  %10391 = vmatpush1.msra.mxu0 0.0
  %10392 = vmatprep.subr.mxu0 0.0
  %10393 = vmatpush1.msra.mxu0 0.0
  %10394 = vmatprep.subr.mxu0 0.0
  %10395 = vmatpush1.msra.mxu0 0.0
  %10396 = vmatprep.subr.mxu0 0.0
  %10397 = vmatpush1.msra.mxu0 0.0
  %10398 = vmatprep.subr.mxu0 0.0
  %10399 = vmatpush1.msra.mxu0 0.0
  %10400 = vmatprep.subr.mxu0 0.0
  %10401 = vmatpush1.msra.mxu0 0.0
  %10402 = vmatprep.subr.mxu0 0.0
  %10403 = vmatpush1.msra.mxu0 0.0
  %10404 = vmatprep.subr.mxu0 0.0
  %10405 = vmatpush1.msra.mxu0 0.0
  %10406 = vmatprep.subr.mxu0 0.0
  %10407 = vmatpush1.msra.mxu0 0.0
  %10408 = vmatprep.subr.mxu0 0.0
  %10409 = vmatpush1.msra.mxu0 0.0
  %10410 = vmatprep.subr.mxu0 0.0
  %10411 = vmatpush1.msra.mxu0 0.0
  %10412 = vmatprep.subr.mxu0 0.0
  %10413 = vmatpush1.msra.mxu0 0.0
  %10414 = vmatprep.subr.mxu0 0.0
  %10415 = vmatpush1.msra.mxu0 0.0
  %10416 = vmatprep.subr.mxu0 0.0
  %10417 = vmatpush1.msra.mxu0 0.0
  %10418 = vmatprep.subr.mxu0 0.0
  %10419 = vmatpush1.msra.mxu0 0.0
  %10420 = vmatprep.subr.mxu0 0.0
  %10421 = vmatpush1.msra.mxu0 0.0
  %10422 = vmatprep.subr.mxu0 0.0
  %10423 = vmatpush1.msra.mxu0 0.0
  %10424 = vmatprep.subr.mxu0 0.0
  %10425 = vmatpush1.msra.mxu0 0.0
  %10426 = vmatprep.subr.mxu0 0.0
  %10427 = vmatpush1.msra.mxu0 0.0
  %10428 = vmatprep.subr.mxu0 0.0
  %10429 = vmatpush1.msra.mxu0 0.0
  %10430 = vmatprep.subr.mxu0 0.0
  %10431 = vmatpush1.msra.mxu0 0.0
  %10432 = vmatprep.subr.mxu0 0.0
  %10433 = vmatpush1.msra.mxu0 0.0
  %10434 = vmatprep.subr.mxu0 0.0
  %10435 = vmatpush1.msra.mxu0 0.0
  %10436 = vmatprep.subr.mxu0 0.0
  %10437 = vmatpush1.msra.mxu0 0.0
  %10438 = vmatprep.subr.mxu0 0.0
  %10439 = vmatpush1.msra.mxu0 0.0
  %10440 = vmatprep.subr.mxu0 0.0
  %10441 = vmatpush1.msra.mxu0 0.0
  %10442 = vmatprep.subr.mxu0 0.0
  %10443 = vmatpush1.msra.mxu0 0.0
  %10444 = vmatprep.subr.mxu0 0.0
  %10445 = vmatpush1.msra.mxu0 0.0
  %10446 = vmatprep.mubr.f32.mxu0 0.0
  %10447 = vmatmul.mubr.f32.gmra.mrb[0].mxu0 %v9594
  %v10448 = vpop.f32.mrb[0].mxu0
  %v10449 = vadd.f32 0.0, %v10448
  %v10450 = vpop.f32.mrb[0].mxu0
  %v10451 = vadd.f32 0.0, %v10450
  %10452 = vdwg.mxu0
  %10453 = vmatprep.subr.mxu0 %v9642
  %10454 = vmatpush1.msra.mxu0 %v9640
  %10455 = vmatprep.subr.mxu0 0.0
  %10456 = vmatpush1.msra.mxu0 0.0
  %10457 = vmatprep.subr.mxu0 0.0
  %10458 = vmatpush1.msra.mxu0 0.0
  %10459 = vmatprep.subr.mxu0 0.0
  %10460 = vmatpush1.msra.mxu0 0.0
  %10461 = vmatprep.subr.mxu0 0.0
  %10462 = vmatpush1.msra.mxu0 0.0
  %10463 = vmatprep.subr.mxu0 0.0
  %10464 = vmatpush1.msra.mxu0 0.0
  %10465 = vmatprep.subr.mxu0 0.0
  %10466 = vmatpush1.msra.mxu0 0.0
  %10467 = vmatprep.subr.mxu0 0.0
  %10468 = vmatpush1.msra.mxu0 0.0
  %10469 = vmatprep.subr.mxu0 0.0
  %10470 = vmatpush1.msra.mxu0 0.0
  %10471 = vmatprep.subr.mxu0 0.0
  %10472 = vmatpush1.msra.mxu0 0.0
  %10473 = vmatprep.subr.mxu0 0.0
  %10474 = vmatpush1.msra.mxu0 0.0
  %10475 = vmatprep.subr.mxu0 0.0
  %10476 = vmatpush1.msra.mxu0 0.0
  %10477 = vmatprep.subr.mxu0 0.0
  %10478 = vmatpush1.msra.mxu0 0.0
  %10479 = vmatprep.subr.mxu0 0.0
  %10480 = vmatpush1.msra.mxu0 0.0
  %10481 = vmatprep.subr.mxu0 0.0
  %10482 = vmatpush1.msra.mxu0 0.0
  %10483 = vmatprep.subr.mxu0 0.0
  %10484 = vmatpush1.msra.mxu0 0.0
  %10485 = vmatprep.subr.mxu0 0.0
  %10486 = vmatpush1.msra.mxu0 0.0
  %10487 = vmatprep.subr.mxu0 0.0
  %10488 = vmatpush1.msra.mxu0 0.0
  %10489 = vmatprep.subr.mxu0 0.0
  %10490 = vmatpush1.msra.mxu0 0.0
  %10491 = vmatprep.subr.mxu0 0.0
  %10492 = vmatpush1.msra.mxu0 0.0
  %10493 = vmatprep.subr.mxu0 0.0
  %10494 = vmatpush1.msra.mxu0 0.0
  %10495 = vmatprep.subr.mxu0 0.0
  %10496 = vmatpush1.msra.mxu0 0.0
  %10497 = vmatprep.subr.mxu0 0.0
  %10498 = vmatpush1.msra.mxu0 0.0
  %10499 = vmatprep.subr.mxu0 0.0
  %10500 = vmatpush1.msra.mxu0 0.0
  %10501 = vmatprep.subr.mxu0 0.0
  %10502 = vmatpush1.msra.mxu0 0.0
  %10503 = vmatprep.subr.mxu0 0.0
  %10504 = vmatpush1.msra.mxu0 0.0
  %10505 = vmatprep.subr.mxu0 0.0
  %10506 = vmatpush1.msra.mxu0 0.0
  %10507 = vmatprep.subr.mxu0 0.0
  %10508 = vmatpush1.msra.mxu0 0.0
  %10509 = vmatprep.subr.mxu0 0.0
  %10510 = vmatpush1.msra.mxu0 0.0
  %10511 = vmatprep.subr.mxu0 0.0
  %10512 = vmatpush1.msra.mxu0 0.0
  %10513 = vmatprep.subr.mxu0 0.0
  %10514 = vmatpush1.msra.mxu0 0.0
  %10515 = vmatprep.subr.mxu0 0.0
  %10516 = vmatpush1.msra.mxu0 0.0
  %10517 = vmatprep.mubr.f32.mxu0 0.0
  %10518 = vmatmul.mubr.f32.gmra.mrb[0].mxu0 %v9594
  %v10519 = vpop.f32.mrb[0].mxu0
  %v10520 = vadd.f32 0.0, %v10519
  %v10521 = vpop.f32.mrb[0].mxu0
  %v10522 = vadd.f32 0.0, %v10521
  %10523 = vdwg.mxu0
  %10524 = vmatprep.subr.mxu0 %v9646
  %10525 = vmatpush1.msra.mxu0 %v9644
  %10526 = vmatprep.subr.mxu0 0.0
  %10527 = vmatpush1.msra.mxu0 0.0
  %10528 = vmatprep.subr.mxu0 0.0
  %10529 = vmatpush1.msra.mxu0 0.0
  %10530 = vmatprep.subr.mxu0 0.0
  %10531 = vmatpush1.msra.mxu0 0.0
  %10532 = vmatprep.subr.mxu0 0.0
  %10533 = vmatpush1.msra.mxu0 0.0
  %10534 = vmatprep.subr.mxu0 0.0
  %10535 = vmatpush1.msra.mxu0 0.0
  %10536 = vmatprep.subr.mxu0 0.0
  %10537 = vmatpush1.msra.mxu0 0.0
  %10538 = vmatprep.subr.mxu0 0.0
  %10539 = vmatpush1.msra.mxu0 0.0
  %10540 = vmatprep.subr.mxu0 0.0
  %10541 = vmatpush1.msra.mxu0 0.0
  %10542 = vmatprep.subr.mxu0 0.0
  %10543 = vmatpush1.msra.mxu0 0.0
  %10544 = vmatprep.subr.mxu0 0.0
  %10545 = vmatpush1.msra.mxu0 0.0
  %10546 = vmatprep.subr.mxu0 0.0
  %10547 = vmatpush1.msra.mxu0 0.0
  %10548 = vmatprep.subr.mxu0 0.0
  %10549 = vmatpush1.msra.mxu0 0.0
  %10550 = vmatprep.subr.mxu0 0.0
  %10551 = vmatpush1.msra.mxu0 0.0
  %10552 = vmatprep.subr.mxu0 0.0
  %10553 = vmatpush1.msra.mxu0 0.0
  %10554 = vmatprep.subr.mxu0 0.0
  %10555 = vmatpush1.msra.mxu0 0.0
  %10556 = vmatprep.subr.mxu0 0.0
  %10557 = vmatpush1.msra.mxu0 0.0
  %10558 = vmatprep.subr.mxu0 0.0
  %10559 = vmatpush1.msra.mxu0 0.0
  %10560 = vmatprep.subr.mxu0 0.0
  %10561 = vmatpush1.msra.mxu0 0.0
  %10562 = vmatprep.subr.mxu0 0.0
  %10563 = vmatpush1.msra.mxu0 0.0
  %10564 = vmatprep.subr.mxu0 0.0
  %10565 = vmatpush1.msra.mxu0 0.0
  %10566 = vmatprep.subr.mxu0 0.0
  %10567 = vmatpush1.msra.mxu0 0.0
  %10568 = vmatprep.subr.mxu0 0.0
  %10569 = vmatpush1.msra.mxu0 0.0
  %10570 = vmatprep.subr.mxu0 0.0
  %10571 = vmatpush1.msra.mxu0 0.0
  %10572 = vmatprep.subr.mxu0 0.0
  %10573 = vmatpush1.msra.mxu0 0.0
  %10574 = vmatprep.subr.mxu0 0.0
  %10575 = vmatpush1.msra.mxu0 0.0
  %10576 = vmatprep.subr.mxu0 0.0
  %10577 = vmatpush1.msra.mxu0 0.0
  %10578 = vmatprep.subr.mxu0 0.0
  %10579 = vmatpush1.msra.mxu0 0.0
  %10580 = vmatprep.subr.mxu0 0.0
  %10581 = vmatpush1.msra.mxu0 0.0
  %10582 = vmatprep.subr.mxu0 0.0
  %10583 = vmatpush1.msra.mxu0 0.0
  %10584 = vmatprep.subr.mxu0 0.0
  %10585 = vmatpush1.msra.mxu0 0.0
  %10586 = vmatprep.subr.mxu0 0.0
  %10587 = vmatpush1.msra.mxu0 0.0
  %10588 = vmatprep.mubr.f32.mxu0 0.0
  %10589 = vmatmul.mubr.f32.gmra.mrb[0].mxu0 %v9594
  %v10590 = vpop.f32.mrb[0].mxu0
  %v10591 = vadd.f32 0.0, %v10590
  %v10592 = vpop.f32.mrb[0].mxu0
  %v10593 = vadd.f32 0.0, %v10592
  %10594 = vdwg.mxu0
  %10595 = vmatprep.subr.mxu0 %v9650
  %10596 = vmatpush1.msra.mxu0 %v9648
  %10597 = vmatprep.subr.mxu0 0.0
  %10598 = vmatpush1.msra.mxu0 0.0
  %10599 = vmatprep.subr.mxu0 0.0
  %10600 = vmatpush1.msra.mxu0 0.0
  %10601 = vmatprep.subr.mxu0 0.0
  %10602 = vmatpush1.msra.mxu0 0.0
  %10603 = vmatprep.subr.mxu0 0.0
  %10604 = vmatpush1.msra.mxu0 0.0
  %10605 = vmatprep.subr.mxu0 0.0
  %10606 = vmatpush1.msra.mxu0 0.0
  %10607 = vmatprep.subr.mxu0 0.0
  %10608 = vmatpush1.msra.mxu0 0.0
  %10609 = vmatprep.subr.mxu0 0.0
  %10610 = vmatpush1.msra.mxu0 0.0
  %10611 = vmatprep.subr.mxu0 0.0
  %10612 = vmatpush1.msra.mxu0 0.0
  %10613 = vmatprep.subr.mxu0 0.0
  %10614 = vmatpush1.msra.mxu0 0.0
  %10615 = vmatprep.subr.mxu0 0.0
  %10616 = vmatpush1.msra.mxu0 0.0
  %10617 = vmatprep.subr.mxu0 0.0
  %10618 = vmatpush1.msra.mxu0 0.0
  %10619 = vmatprep.subr.mxu0 0.0
  %10620 = vmatpush1.msra.mxu0 0.0
  %10621 = vmatprep.subr.mxu0 0.0
  %10622 = vmatpush1.msra.mxu0 0.0
  %10623 = vmatprep.subr.mxu0 0.0
  %10624 = vmatpush1.msra.mxu0 0.0
  %10625 = vmatprep.subr.mxu0 0.0
  %10626 = vmatpush1.msra.mxu0 0.0
  %10627 = vmatprep.subr.mxu0 0.0
  %10628 = vmatpush1.msra.mxu0 0.0
  %10629 = vmatprep.subr.mxu0 0.0
  %10630 = vmatpush1.msra.mxu0 0.0
  %10631 = vmatprep.subr.mxu0 0.0
  %10632 = vmatpush1.msra.mxu0 0.0
  %10633 = vmatprep.subr.mxu0 0.0
  %10634 = vmatpush1.msra.mxu0 0.0
  %10635 = vmatprep.subr.mxu0 0.0
  %10636 = vmatpush1.msra.mxu0 0.0
  %10637 = vmatprep.subr.mxu0 0.0
  %10638 = vmatpush1.msra.mxu0 0.0
  %10639 = vmatprep.subr.mxu0 0.0
  %10640 = vmatpush1.msra.mxu0 0.0
  %10641 = vmatprep.subr.mxu0 0.0
  %10642 = vmatpush1.msra.mxu0 0.0
  %10643 = vmatprep.subr.mxu0 0.0
  %10644 = vmatpush1.msra.mxu0 0.0
  %10645 = vmatprep.subr.mxu0 0.0
  %10646 = vmatpush1.msra.mxu0 0.0
  %10647 = vmatprep.subr.mxu0 0.0
  %10648 = vmatpush1.msra.mxu0 0.0
  %10649 = vmatprep.subr.mxu0 0.0
  %10650 = vmatpush1.msra.mxu0 0.0
  %10651 = vmatprep.subr.mxu0 0.0
  %10652 = vmatpush1.msra.mxu0 0.0
  %10653 = vmatprep.subr.mxu0 0.0
  %10654 = vmatpush1.msra.mxu0 0.0
  %10655 = vmatprep.subr.mxu0 0.0
  %10656 = vmatpush1.msra.mxu0 0.0
  %10657 = vmatprep.subr.mxu0 0.0
  %10658 = vmatpush1.msra.mxu0 0.0
  %10659 = vmatprep.mubr.f32.mxu0 0.0
  %10660 = vmatmul.mubr.f32.gmra.mrb[0].mxu0 %v9594
  %v10661 = vpop.f32.mrb[0].mxu0
  %v10662 = vadd.f32 0.0, %v10661
  %v10663 = vpop.f32.mrb[0].mxu0
  %v10664 = vadd.f32 0.0, %v10663
  %10665 = vdwg.mxu0
  %10666 = vmatprep.subr.mxu0 %v9654
  %10667 = vmatpush1.msra.mxu0 %v9652
  %10668 = vmatprep.subr.mxu0 0.0
  %10669 = vmatpush1.msra.mxu0 0.0
  %10670 = vmatprep.subr.mxu0 0.0
  %10671 = vmatpush1.msra.mxu0 0.0
  %10672 = vmatprep.subr.mxu0 0.0
  %10673 = vmatpush1.msra.mxu0 0.0
  %10674 = vmatprep.subr.mxu0 0.0
  %10675 = vmatpush1.msra.mxu0 0.0
  %10676 = vmatprep.subr.mxu0 0.0
  %10677 = vmatpush1.msra.mxu0 0.0
  %10678 = vmatprep.subr.mxu0 0.0
  %10679 = vmatpush1.msra.mxu0 0.0
  %10680 = vmatprep.subr.mxu0 0.0
  %10681 = vmatpush1.msra.mxu0 0.0
  %10682 = vmatprep.subr.mxu0 0.0
  %10683 = vmatpush1.msra.mxu0 0.0
  %10684 = vmatprep.subr.mxu0 0.0
  %10685 = vmatpush1.msra.mxu0 0.0
  %10686 = vmatprep.subr.mxu0 0.0
  %10687 = vmatpush1.msra.mxu0 0.0
  %10688 = vmatprep.subr.mxu0 0.0
  %10689 = vmatpush1.msra.mxu0 0.0
  %10690 = vmatprep.subr.mxu0 0.0
  %10691 = vmatpush1.msra.mxu0 0.0
  %10692 = vmatprep.subr.mxu0 0.0
  %10693 = vmatpush1.msra.mxu0 0.0
  %10694 = vmatprep.subr.mxu0 0.0
  %10695 = vmatpush1.msra.mxu0 0.0
  %10696 = vmatprep.subr.mxu0 0.0
  %10697 = vmatpush1.msra.mxu0 0.0
  %10698 = vmatprep.subr.mxu0 0.0
  %10699 = vmatpush1.msra.mxu0 0.0
  %10700 = vmatprep.subr.mxu0 0.0
  %10701 = vmatpush1.msra.mxu0 0.0
  %10702 = vmatprep.subr.mxu0 0.0
  %10703 = vmatpush1.msra.mxu0 0.0
  %10704 = vmatprep.subr.mxu0 0.0
  %10705 = vmatpush1.msra.mxu0 0.0
  %10706 = vmatprep.subr.mxu0 0.0
  %10707 = vmatpush1.msra.mxu0 0.0
  %10708 = vmatprep.subr.mxu0 0.0
  %10709 = vmatpush1.msra.mxu0 0.0
  %10710 = vmatprep.subr.mxu0 0.0
  %10711 = vmatpush1.msra.mxu0 0.0
  %10712 = vmatprep.subr.mxu0 0.0
  %10713 = vmatpush1.msra.mxu0 0.0
  %10714 = vmatprep.subr.mxu0 0.0
  %10715 = vmatpush1.msra.mxu0 0.0
  %10716 = vmatprep.subr.mxu0 0.0
  %10717 = vmatpush1.msra.mxu0 0.0
  %10718 = vmatprep.subr.mxu0 0.0
  %10719 = vmatpush1.msra.mxu0 0.0
  %10720 = vmatprep.subr.mxu0 0.0
  %10721 = vmatpush1.msra.mxu0 0.0
  %10722 = vmatprep.subr.mxu0 0.0
  %10723 = vmatpush1.msra.mxu0 0.0
  %10724 = vmatprep.subr.mxu0 0.0
  %10725 = vmatpush1.msra.mxu0 0.0
  %10726 = vmatprep.subr.mxu0 0.0
  %10727 = vmatpush1.msra.mxu0 0.0
  %10728 = vmatprep.subr.mxu0 0.0
  %10729 = vmatpush1.msra.mxu0 0.0
  %10730 = vmatprep.mubr.f32.mxu0 0.0
  %10731 = vmatmul.mubr.f32.gmra.mrb[0].mxu0 %v9594
  %v10732 = vpop.f32.mrb[0].mxu0
  %v10733 = vadd.f32 0.0, %v10732
  %v10734 = vpop.f32.mrb[0].mxu0
  %v10735 = vadd.f32 0.0, %v10734
  %10736 = vdwg.mxu0
  %10737 = vmatprep.subr.mxu0 %v9658
  %10738 = vmatpush1.msra.mxu0 %v9656
  %10739 = vmatprep.subr.mxu0 0.0
  %10740 = vmatpush1.msra.mxu0 0.0
  %10741 = vmatprep.subr.mxu0 0.0
  %10742 = vmatpush1.msra.mxu0 0.0
  %10743 = vmatprep.subr.mxu0 0.0
  %10744 = vmatpush1.msra.mxu0 0.0
  %10745 = vmatprep.subr.mxu0 0.0
  %10746 = vmatpush1.msra.mxu0 0.0
  %10747 = vmatprep.subr.mxu0 0.0
  %10748 = vmatpush1.msra.mxu0 0.0
  %10749 = vmatprep.subr.mxu0 0.0
  %10750 = vmatpush1.msra.mxu0 0.0
  %10751 = vmatprep.subr.mxu0 0.0
  %10752 = vmatpush1.msra.mxu0 0.0
  %10753 = vmatprep.subr.mxu0 0.0
  %10754 = vmatpush1.msra.mxu0 0.0
  %10755 = vmatprep.subr.mxu0 0.0
  %10756 = vmatpush1.msra.mxu0 0.0
  %10757 = vmatprep.subr.mxu0 0.0
  %10758 = vmatpush1.msra.mxu0 0.0
  %10759 = vmatprep.subr.mxu0 0.0
  %10760 = vmatpush1.msra.mxu0 0.0
  %10761 = vmatprep.subr.mxu0 0.0
  %10762 = vmatpush1.msra.mxu0 0.0
  %10763 = vmatprep.subr.mxu0 0.0
  %10764 = vmatpush1.msra.mxu0 0.0
  %10765 = vmatprep.subr.mxu0 0.0
  %10766 = vmatpush1.msra.mxu0 0.0
  %10767 = vmatprep.subr.mxu0 0.0
  %10768 = vmatpush1.msra.mxu0 0.0
  %10769 = vmatprep.subr.mxu0 0.0
  %10770 = vmatpush1.msra.mxu0 0.0
  %10771 = vmatprep.subr.mxu0 0.0
  %10772 = vmatpush1.msra.mxu0 0.0
  %10773 = vmatprep.subr.mxu0 0.0
  %10774 = vmatpush1.msra.mxu0 0.0
  %10775 = vmatprep.subr.mxu0 0.0
  %10776 = vmatpush1.msra.mxu0 0.0
  %10777 = vmatprep.subr.mxu0 0.0
  %10778 = vmatpush1.msra.mxu0 0.0
  %10779 = vmatprep.subr.mxu0 0.0
  %10780 = vmatpush1.msra.mxu0 0.0
  %10781 = vmatprep.subr.mxu0 0.0
  %10782 = vmatpush1.msra.mxu0 0.0
  %10783 = vmatprep.subr.mxu0 0.0
  %10784 = vmatpush1.msra.mxu0 0.0
  %10785 = vmatprep.subr.mxu0 0.0
  %10786 = vmatpush1.msra.mxu0 0.0
  %10787 = vmatprep.subr.mxu0 0.0
  %10788 = vmatpush1.msra.mxu0 0.0
  %10789 = vmatprep.subr.mxu0 0.0
  %10790 = vmatpush1.msra.mxu0 0.0
  %10791 = vmatprep.subr.mxu0 0.0
  %10792 = vmatpush1.msra.mxu0 0.0
  %10793 = vmatprep.subr.mxu0 0.0
  %10794 = vmatpush1.msra.mxu0 0.0
  %10795 = vmatprep.subr.mxu0 0.0
  %10796 = vmatpush1.msra.mxu0 0.0
  %10797 = vmatprep.subr.mxu0 0.0
  %10798 = vmatpush1.msra.mxu0 0.0
  %10799 = vmatprep.subr.mxu0 0.0
  %10800 = vmatpush1.msra.mxu0 0.0
  %10801 = vmatprep.mubr.f32.mxu0 0.0
  %10802 = vmatmul.mubr.f32.gmra.mrb[0].mxu0 %v9594
  %v10803 = vpop.f32.mrb[0].mxu0
  %v10804 = vadd.f32 0.0, %v10803
  %v10805 = vpop.f32.mrb[0].mxu0
  %v10806 = vadd.f32 0.0, %v10805
  %10807 = vdwg.mxu0
  %10808 = vmatprep.subr.mxu0 %v9662
  %10809 = vmatpush1.msra.mxu0 %v9660
  %10810 = vmatprep.subr.mxu0 0.0
  %10811 = vmatpush1.msra.mxu0 0.0
  %10812 = vmatprep.subr.mxu0 0.0
  %10813 = vmatpush1.msra.mxu0 0.0
  %10814 = vmatprep.subr.mxu0 0.0
  %10815 = vmatpush1.msra.mxu0 0.0
  %10816 = vmatprep.subr.mxu0 0.0
  %10817 = vmatpush1.msra.mxu0 0.0
  %10818 = vmatprep.subr.mxu0 0.0
  %10819 = vmatpush1.msra.mxu0 0.0
  %10820 = vmatprep.subr.mxu0 0.0
  %10821 = vmatpush1.msra.mxu0 0.0
  %10822 = vmatprep.subr.mxu0 0.0
  %10823 = vmatpush1.msra.mxu0 0.0
  %10824 = vmatprep.subr.mxu0 0.0
  %10825 = vmatpush1.msra.mxu0 0.0
  %10826 = vmatprep.subr.mxu0 0.0
  %10827 = vmatpush1.msra.mxu0 0.0
  %10828 = vmatprep.subr.mxu0 0.0
  %10829 = vmatpush1.msra.mxu0 0.0
  %10830 = vmatprep.subr.mxu0 0.0
  %10831 = vmatpush1.msra.mxu0 0.0
  %10832 = vmatprep.subr.mxu0 0.0
  %10833 = vmatpush1.msra.mxu0 0.0
  %10834 = vmatprep.subr.mxu0 0.0
  %10835 = vmatpush1.msra.mxu0 0.0
  %10836 = vmatprep.subr.mxu0 0.0
  %10837 = vmatpush1.msra.mxu0 0.0
  %10838 = vmatprep.subr.mxu0 0.0
  %10839 = vmatpush1.msra.mxu0 0.0
  %10840 = vmatprep.subr.mxu0 0.0
  %10841 = vmatpush1.msra.mxu0 0.0
  %10842 = vmatprep.subr.mxu0 0.0
  %10843 = vmatpush1.msra.mxu0 0.0
  %10844 = vmatprep.subr.mxu0 0.0
  %10845 = vmatpush1.msra.mxu0 0.0
  %10846 = vmatprep.subr.mxu0 0.0
  %10847 = vmatpush1.msra.mxu0 0.0
  %10848 = vmatprep.subr.mxu0 0.0
  %10849 = vmatpush1.msra.mxu0 0.0
  %10850 = vmatprep.subr.mxu0 0.0
  %10851 = vmatpush1.msra.mxu0 0.0
  %10852 = vmatprep.subr.mxu0 0.0
  %10853 = vmatpush1.msra.mxu0 0.0
  %10854 = vmatprep.subr.mxu0 0.0
  %10855 = vmatpush1.msra.mxu0 0.0
  %10856 = vmatprep.subr.mxu0 0.0
  %10857 = vmatpush1.msra.mxu0 0.0
  %10858 = vmatprep.subr.mxu0 0.0
  %10859 = vmatpush1.msra.mxu0 0.0
  %10860 = vmatprep.subr.mxu0 0.0
  %10861 = vmatpush1.msra.mxu0 0.0
  %10862 = vmatprep.subr.mxu0 0.0
  %10863 = vmatpush1.msra.mxu0 0.0
  %10864 = vmatprep.subr.mxu0 0.0
  %10865 = vmatpush1.msra.mxu0 0.0
  %10866 = vmatprep.subr.mxu0 0.0
  %10867 = vmatpush1.msra.mxu0 0.0
  %10868 = vmatprep.subr.mxu0 0.0
  %10869 = vmatpush1.msra.mxu0 0.0
  %10870 = vmatprep.subr.mxu0 0.0
  %10871 = vmatpush1.msra.mxu0 0.0
  %10872 = vmatprep.mubr.f32.mxu0 0.0
  %10873 = vmatmul.mubr.f32.gmra.mrb[0].mxu0 %v9594
  %v10874 = vpop.f32.mrb[0].mxu0
  %v10875 = vadd.f32 0.0, %v10874
  %v10876 = vpop.f32.mrb[0].mxu0
  %v10877 = vadd.f32 0.0, %v10876
  %10878 = vdwg.mxu0
  %10879 = vmatprep.subr.mxu0 %v9666
  %10880 = vmatpush1.msra.mxu0 %v9664
  %10881 = vmatprep.subr.mxu0 0.0
  %10882 = vmatpush1.msra.mxu0 0.0
  %10883 = vmatprep.subr.mxu0 0.0
  %10884 = vmatpush1.msra.mxu0 0.0
  %10885 = vmatprep.subr.mxu0 0.0
  %10886 = vmatpush1.msra.mxu0 0.0
  %10887 = vmatprep.subr.mxu0 0.0
  %10888 = vmatpush1.msra.mxu0 0.0
  %10889 = vmatprep.subr.mxu0 0.0
  %10890 = vmatpush1.msra.mxu0 0.0
  %10891 = vmatprep.subr.mxu0 0.0
  %10892 = vmatpush1.msra.mxu0 0.0
  %10893 = vmatprep.subr.mxu0 0.0
  %10894 = vmatpush1.msra.mxu0 0.0
  %10895 = vmatprep.subr.mxu0 0.0
  %10896 = vmatpush1.msra.mxu0 0.0
  %10897 = vmatprep.subr.mxu0 0.0
  %10898 = vmatpush1.msra.mxu0 0.0
  %10899 = vmatprep.subr.mxu0 0.0
  %10900 = vmatpush1.msra.mxu0 0.0
  %10901 = vmatprep.subr.mxu0 0.0
  %10902 = vmatpush1.msra.mxu0 0.0
  %10903 = vmatprep.subr.mxu0 0.0
  %10904 = vmatpush1.msra.mxu0 0.0
  %10905 = vmatprep.subr.mxu0 0.0
  %10906 = vmatpush1.msra.mxu0 0.0
  %10907 = vmatprep.subr.mxu0 0.0
  %10908 = vmatpush1.msra.mxu0 0.0
  %10909 = vmatprep.subr.mxu0 0.0
  %10910 = vmatpush1.msra.mxu0 0.0
  %10911 = vmatprep.subr.mxu0 0.0
  %10912 = vmatpush1.msra.mxu0 0.0
  %10913 = vmatprep.subr.mxu0 0.0
  %10914 = vmatpush1.msra.mxu0 0.0
  %10915 = vmatprep.subr.mxu0 0.0
  %10916 = vmatpush1.msra.mxu0 0.0
  %10917 = vmatprep.subr.mxu0 0.0
  %10918 = vmatpush1.msra.mxu0 0.0
  %10919 = vmatprep.subr.mxu0 0.0
  %10920 = vmatpush1.msra.mxu0 0.0
  %10921 = vmatprep.subr.mxu0 0.0
  %10922 = vmatpush1.msra.mxu0 0.0
  %10923 = vmatprep.subr.mxu0 0.0
  %10924 = vmatpush1.msra.mxu0 0.0
  %10925 = vmatprep.subr.mxu0 0.0
  %10926 = vmatpush1.msra.mxu0 0.0
  %10927 = vmatprep.subr.mxu0 0.0
  %10928 = vmatpush1.msra.mxu0 0.0
  %10929 = vmatprep.subr.mxu0 0.0
  %10930 = vmatpush1.msra.mxu0 0.0
  %10931 = vmatprep.subr.mxu0 0.0
  %10932 = vmatpush1.msra.mxu0 0.0
  %10933 = vmatprep.subr.mxu0 0.0
  %10934 = vmatpush1.msra.mxu0 0.0
  %10935 = vmatprep.subr.mxu0 0.0
  %10936 = vmatpush1.msra.mxu0 0.0
  %10937 = vmatprep.subr.mxu0 0.0
  %10938 = vmatpush1.msra.mxu0 0.0
  %10939 = vmatprep.subr.mxu0 0.0
  %10940 = vmatpush1.msra.mxu0 0.0
  %10941 = vmatprep.subr.mxu0 0.0
  %10942 = vmatpush1.msra.mxu0 0.0
  %10943 = vmatprep.mubr.f32.mxu0 0.0
  %10944 = vmatmul.mubr.f32.gmra.mrb[0].mxu0 %v9594
  %v10945 = vpop.f32.mrb[0].mxu0
  %v10946 = vadd.f32 0.0, %v10945
  %v10947 = vpop.f32.mrb[0].mxu0
  %v10948 = vadd.f32 0.0, %v10947
  %10949 = vdwg.mxu0
  %10950 = vmatprep.subr.mxu0 %v9670
  %10951 = vmatpush1.msra.mxu0 %v9668
  %10952 = vmatprep.subr.mxu0 0.0
  %10953 = vmatpush1.msra.mxu0 0.0
  %10954 = vmatprep.subr.mxu0 0.0
  %10955 = vmatpush1.msra.mxu0 0.0
  %10956 = vmatprep.subr.mxu0 0.0
  %10957 = vmatpush1.msra.mxu0 0.0
  %10958 = vmatprep.subr.mxu0 0.0
  %10959 = vmatpush1.msra.mxu0 0.0
  %10960 = vmatprep.subr.mxu0 0.0
  %10961 = vmatpush1.msra.mxu0 0.0
  %10962 = vmatprep.subr.mxu0 0.0
  %10963 = vmatpush1.msra.mxu0 0.0
  %10964 = vmatprep.subr.mxu0 0.0
  %10965 = vmatpush1.msra.mxu0 0.0
  %10966 = vmatprep.subr.mxu0 0.0
  %10967 = vmatpush1.msra.mxu0 0.0
  %10968 = vmatprep.subr.mxu0 0.0
  %10969 = vmatpush1.msra.mxu0 0.0
  %10970 = vmatprep.subr.mxu0 0.0
  %10971 = vmatpush1.msra.mxu0 0.0
  %10972 = vmatprep.subr.mxu0 0.0
  %10973 = vmatpush1.msra.mxu0 0.0
  %10974 = vmatprep.subr.mxu0 0.0
  %10975 = vmatpush1.msra.mxu0 0.0
  %10976 = vmatprep.subr.mxu0 0.0
  %10977 = vmatpush1.msra.mxu0 0.0
  %10978 = vmatprep.subr.mxu0 0.0
  %10979 = vmatpush1.msra.mxu0 0.0
  %10980 = vmatprep.subr.mxu0 0.0
  %10981 = vmatpush1.msra.mxu0 0.0
  %10982 = vmatprep.subr.mxu0 0.0
  %10983 = vmatpush1.msra.mxu0 0.0
  %10984 = vmatprep.subr.mxu0 0.0
  %10985 = vmatpush1.msra.mxu0 0.0
  %10986 = vmatprep.subr.mxu0 0.0
  %10987 = vmatpush1.msra.mxu0 0.0
  %10988 = vmatprep.subr.mxu0 0.0
  %10989 = vmatpush1.msra.mxu0 0.0
  %10990 = vmatprep.subr.mxu0 0.0
  %10991 = vmatpush1.msra.mxu0 0.0
  %10992 = vmatprep.subr.mxu0 0.0
  %10993 = vmatpush1.msra.mxu0 0.0
  %10994 = vmatprep.subr.mxu0 0.0
  %10995 = vmatpush1.msra.mxu0 0.0
  %10996 = vmatprep.subr.mxu0 0.0
  %10997 = vmatpush1.msra.mxu0 0.0
  %10998 = vmatprep.subr.mxu0 0.0
  %10999 = vmatpush1.msra.mxu0 0.0
  %11000 = vmatprep.subr.mxu0 0.0
  %11001 = vmatpush1.msra.mxu0 0.0
  %11002 = vmatprep.subr.mxu0 0.0
  %11003 = vmatpush1.msra.mxu0 0.0
  %11004 = vmatprep.subr.mxu0 0.0
  %11005 = vmatpush1.msra.mxu0 0.0
  %11006 = vmatprep.subr.mxu0 0.0
  %11007 = vmatpush1.msra.mxu0 0.0
  %11008 = vmatprep.subr.mxu0 0.0
  %11009 = vmatpush1.msra.mxu0 0.0
  %11010 = vmatprep.subr.mxu0 0.0
  %11011 = vmatpush1.msra.mxu0 0.0
  %11012 = vmatprep.subr.mxu0 0.0
  %11013 = vmatpush1.msra.mxu0 0.0
  %11014 = vmatprep.mubr.f32.mxu0 0.0
  %11015 = vmatmul.mubr.f32.gmra.mrb[0].mxu0 %v9594
  %v11016 = vpop.f32.mrb[0].mxu0
  %v11017 = vadd.f32 0.0, %v11016
  %v11018 = vpop.f32.mrb[0].mxu0
  %v11019 = vadd.f32 0.0, %v11018
  %11020 = vdwg.mxu0
  %v11021 = vadd.f32 %v9435, %v9739
  %v11022 = vadd.f32 %v9436, %v9741
  %v11023 = vadd.f32 %v9437, %v9810
  %v11024 = vadd.f32 %v9438, %v9812
  %v11025 = vadd.f32 %v9439, %v9881
  %v11026 = vadd.f32 %v9440, %v9883
  %v11027 = vadd.f32 %v9441, %v9952
  %v11028 = vadd.f32 %v9442, %v9954
  %v11029 = vadd.f32 %v9443, %v10023
  %v11030 = vadd.f32 %v9444, %v10025
  %v11031 = vadd.f32 %v9445, %v10094
  %v11032 = vadd.f32 %v9446, %v10096
  %v11033 = vadd.f32 %v9447, %v10165
  %v11034 = vadd.f32 %v9448, %v10167
  %v11035 = vadd.f32 %v9449, %v10236
  %v11036 = vadd.f32 %v9450, %v10238
  %v11037 = vadd.f32 %v9451, %v10307
  %v11038 = vadd.f32 %v9452, %v10309
  %v11039 = vadd.f32 %v9453, %v10378
  %v11040 = vadd.f32 %v9454, %v10380
  %v11041 = vadd.f32 %v9455, %v10449
  %v11042 = vadd.f32 %v9456, %v10451
  %v11043 = vadd.f32 %v9457, %v10520
  %v11044 = vadd.f32 %v9458, %v10522
  %v11045 = vadd.f32 %v9459, %v10591
  %v11046 = vadd.f32 %v9460, %v10593
  %v11047 = vadd.f32 %v9461, %v10662
  %v11048 = vadd.f32 %v9462, %v10664
  %v11049 = vadd.f32 %v9463, %v10733
  %v11050 = vadd.f32 %v9464, %v10735
  %v11051 = vadd.f32 %v9465, %v10804
  %v11052 = vadd.f32 %v9466, %v10806
  %v11053 = vadd.f32 %v9467, %v10875
  %v11054 = vadd.f32 %v9468, %v10877
  %v11055 = vadd.f32 %v9469, %v10946
  %v11056 = vadd.f32 %v9470, %v10948
  %v11057 = vadd.f32 %v9471, %v11017
  %v11058 = vadd.f32 %v9472, %v11019
  %s11059 = scalar_lea.vmem %s1, 56
  %v11060 = vld [vmem:[%s11059] sm:$0xff]
  %11061 = vrot.lane.b32.xlu0 %v60, 115
  %v11062 = vpop.permute.xlu0 %11061
  %11063 = vrot.lane.b32.xlu0 %v15, 115
  %v11064 = vpop.permute.xlu0 %11063
  %11065 = vrot.lane.b32.xlu0 %v61, 115
  %v11066 = vpop.permute.xlu0 %11065
  %11067 = vrot.lane.b32.xlu0 %v16, 115
  %v11068 = vpop.permute.xlu0 %11067
  %11069 = vrot.lane.b32.xlu0 %v62, 115
  %v11070 = vpop.permute.xlu0 %11069
  %11071 = vrot.lane.b32.xlu0 %v17, 115
  %v11072 = vpop.permute.xlu0 %11071
  %11073 = vrot.lane.b32.xlu0 %v63, 115
  %v11074 = vpop.permute.xlu0 %11073
  %11075 = vrot.lane.b32.xlu0 %v18, 115
  %v11076 = vpop.permute.xlu0 %11075
  %11077 = vrot.lane.b32.xlu0 %v64, 115
  %v11078 = vpop.permute.xlu0 %11077
  %11079 = vrot.lane.b32.xlu0 %v19, 115
  %v11080 = vpop.permute.xlu0 %11079
  %11081 = vrot.lane.b32.xlu0 %v65, 115
  %v11082 = vpop.permute.xlu0 %11081
  %11083 = vrot.lane.b32.xlu0 %v20, 115
  %v11084 = vpop.permute.xlu0 %11083
  %11085 = vrot.lane.b32.xlu0 %v66, 115
  %v11086 = vpop.permute.xlu0 %11085
  %11087 = vrot.lane.b32.xlu0 %v21, 115
  %v11088 = vpop.permute.xlu0 %11087
  %11089 = vrot.lane.b32.xlu0 %v67, 115
  %v11090 = vpop.permute.xlu0 %11089
  %11091 = vrot.lane.b32.xlu0 %v22, 115
  %v11092 = vpop.permute.xlu0 %11091
  %11093 = vrot.lane.b32.xlu0 %v68, 115
  %v11094 = vpop.permute.xlu0 %11093
  %11095 = vrot.lane.b32.xlu0 %v23, 115
  %v11096 = vpop.permute.xlu0 %11095
  %11097 = vrot.lane.b32.xlu0 %v69, 115
  %v11098 = vpop.permute.xlu0 %11097
  %11099 = vrot.lane.b32.xlu0 %v24, 115
  %v11100 = vpop.permute.xlu0 %11099
  %11101 = vrot.lane.b32.xlu0 %v70, 115
  %v11102 = vpop.permute.xlu0 %11101
  %11103 = vrot.lane.b32.xlu0 %v25, 115
  %v11104 = vpop.permute.xlu0 %11103
  %11105 = vrot.lane.b32.xlu0 %v71, 115
  %v11106 = vpop.permute.xlu0 %11105
  %11107 = vrot.lane.b32.xlu0 %v26, 115
  %v11108 = vpop.permute.xlu0 %11107
  %11109 = vrot.lane.b32.xlu0 %v72, 115
  %v11110 = vpop.permute.xlu0 %11109
  %11111 = vrot.lane.b32.xlu0 %v27, 115
  %v11112 = vpop.permute.xlu0 %11111
  %11113 = vrot.lane.b32.xlu0 %v73, 115
  %v11114 = vpop.permute.xlu0 %11113
  %11115 = vrot.lane.b32.xlu0 %v28, 115
  %v11116 = vpop.permute.xlu0 %11115
  %11117 = vrot.lane.b32.xlu0 %v74, 115
  %v11118 = vpop.permute.xlu0 %11117
  %11119 = vrot.lane.b32.xlu0 %v29, 115
  %v11120 = vpop.permute.xlu0 %11119
  %11121 = vrot.lane.b32.xlu0 %v75, 115
  %v11122 = vpop.permute.xlu0 %11121
  %11123 = vrot.lane.b32.xlu0 %v30, 115
  %v11124 = vpop.permute.xlu0 %11123
  %11125 = vrot.lane.b32.xlu0 %v76, 115
  %v11126 = vpop.permute.xlu0 %11125
  %11127 = vrot.lane.b32.xlu0 %v31, 115
  %v11128 = vpop.permute.xlu0 %11127
  %11129 = vrot.lane.b32.xlu0 %v77, 115
  %v11130 = vpop.permute.xlu0 %11129
  %11131 = vrot.lane.b32.xlu0 %v32, 115
  %v11132 = vpop.permute.xlu0 %11131
  %11133 = vrot.lane.b32.xlu0 %v78, 115
  %v11134 = vpop.permute.xlu0 %11133
  %11135 = vrot.lane.b32.xlu0 %v33, 115
  %v11136 = vpop.permute.xlu0 %11135
  %11137 = vrot.lane.b32.xlu0 %v9475, 115
  %v11138 = vpop.permute.xlu0 %11137
  %vm11139 = vcmask 941056
  %v11140 = vsel %vm11139, %v11062, %v11064
  %v11141 = vsel %vm11139, %v11064, %v11066
  %v11142 = vsel %vm11139, %v11066, %v11068
  %v11143 = vsel %vm11139, %v11068, %v11070
  %v11144 = vsel %vm11139, %v11070, %v11072
  %v11145 = vsel %vm11139, %v11072, %v11074
  %v11146 = vsel %vm11139, %v11074, %v11076
  %v11147 = vsel %vm11139, %v11076, %v11078
  %v11148 = vsel %vm11139, %v11078, %v11080
  %v11149 = vsel %vm11139, %v11080, %v11082
  %v11150 = vsel %vm11139, %v11082, %v11084
  %v11151 = vsel %vm11139, %v11084, %v11086
  %v11152 = vsel %vm11139, %v11086, %v11088
  %v11153 = vsel %vm11139, %v11088, %v11090
  %v11154 = vsel %vm11139, %v11090, %v11092
  %v11155 = vsel %vm11139, %v11092, %v11094
  %v11156 = vsel %vm11139, %v11094, %v11096
  %v11157 = vsel %vm11139, %v11096, %v11098
  %v11158 = vsel %vm11139, %v11098, %v11100
  %v11159 = vsel %vm11139, %v11100, %v11102
  %v11160 = vsel %vm11139, %v11102, %v11104
  %v11161 = vsel %vm11139, %v11104, %v11106
  %v11162 = vsel %vm11139, %v11106, %v11108
  %v11163 = vsel %vm11139, %v11108, %v11110
  %v11164 = vsel %vm11139, %v11110, %v11112
  %v11165 = vsel %vm11139, %v11112, %v11114
  %v11166 = vsel %vm11139, %v11114, %v11116
  %v11167 = vsel %vm11139, %v11116, %v11118
  %v11168 = vsel %vm11139, %v11118, %v11120
  %v11169 = vsel %vm11139, %v11120, %v11122
  %v11170 = vsel %vm11139, %v11122, %v11124
  %v11171 = vsel %vm11139, %v11124, %v11126
  %v11172 = vsel %vm11139, %v11126, %v11128
  %v11173 = vsel %vm11139, %v11128, %v11130
  %v11174 = vsel %vm11139, %v11130, %v11132
  %v11175 = vsel %vm11139, %v11132, %v11134
  %v11176 = vsel %vm11139, %v11134, %v11136
  %v11177 = vsel %vm11139, %v11136, %v11138
  %v11179 = vsel %vm79, %v11060, 0
  %v11181 = vsel %vm83, %v11140, 0
  %v11183 = vsel %vm83, %v11141, 0
  %v11185 = vsel %vm83, %v11142, 0
  %v11187 = vsel %vm83, %v11143, 0
  %v11189 = vsel %vm83, %v11144, 0
  %v11191 = vsel %vm83, %v11145, 0
  %v11193 = vsel %vm83, %v11146, 0
  %v11195 = vsel %vm83, %v11147, 0
  %v11197 = vsel %vm83, %v11148, 0
  %v11199 = vsel %vm83, %v11149, 0
  %v11201 = vsel %vm83, %v11150, 0
  %v11203 = vsel %vm83, %v11151, 0
  %v11205 = vsel %vm83, %v11152, 0
  %v11207 = vsel %vm83, %v11153, 0
  %v11209 = vsel %vm83, %v11154, 0
  %v11211 = vsel %vm83, %v11155, 0
  %v11213 = vsel %vm83, %v11156, 0
  %v11215 = vsel %vm83, %v11157, 0
  %v11217 = vsel %vm83, %v11158, 0
  %v11219 = vsel %vm83, %v11159, 0
  %v11221 = vsel %vm83, %v11160, 0
  %v11223 = vsel %vm83, %v11161, 0
  %v11225 = vsel %vm83, %v11162, 0
  %v11227 = vsel %vm83, %v11163, 0
  %v11229 = vsel %vm83, %v11164, 0
  %v11231 = vsel %vm83, %v11165, 0
  %v11233 = vsel %vm83, %v11166, 0
  %v11235 = vsel %vm83, %v11167, 0
  %v11237 = vsel %vm83, %v11168, 0
  %v11239 = vsel %vm83, %v11169, 0
  %v11241 = vsel %vm83, %v11170, 0
  %v11243 = vsel %vm83, %v11171, 0
  %v11245 = vsel %vm83, %v11172, 0
  %v11247 = vsel %vm83, %v11173, 0
  %v11249 = vsel %vm83, %v11174, 0
  %v11251 = vsel %vm83, %v11175, 0
  %v11253 = vsel %vm83, %v11176, 0
  %v11255 = vsel %vm83, %v11177, 0
  %11257 = vmatprep.subr.mxu0 %v11183
  %11258 = vmatpush1.msra.mxu0 %v11181
  %11259 = vmatprep.subr.mxu0 0.0
  %11260 = vmatpush1.msra.mxu0 0.0
  %11261 = vmatprep.subr.mxu0 0.0
  %11262 = vmatpush1.msra.mxu0 0.0
  %11263 = vmatprep.subr.mxu0 0.0
  %11264 = vmatpush1.msra.mxu0 0.0
  %11265 = vmatprep.subr.mxu0 0.0
  %11266 = vmatpush1.msra.mxu0 0.0
  %11267 = vmatprep.subr.mxu0 0.0
  %11268 = vmatpush1.msra.mxu0 0.0
  %11269 = vmatprep.subr.mxu0 0.0
  %11270 = vmatpush1.msra.mxu0 0.0
  %11271 = vmatprep.subr.mxu0 0.0
  %11272 = vmatpush1.msra.mxu0 0.0
  %11273 = vmatprep.subr.mxu0 0.0
  %11274 = vmatpush1.msra.mxu0 0.0
  %11275 = vmatprep.subr.mxu0 0.0
  %11276 = vmatpush1.msra.mxu0 0.0
  %11277 = vmatprep.subr.mxu0 0.0
  %11278 = vmatpush1.msra.mxu0 0.0
  %11279 = vmatprep.subr.mxu0 0.0
  %11280 = vmatpush1.msra.mxu0 0.0
  %11281 = vmatprep.subr.mxu0 0.0
  %11282 = vmatpush1.msra.mxu0 0.0
  %11283 = vmatprep.subr.mxu0 0.0
  %11284 = vmatpush1.msra.mxu0 0.0
  %11285 = vmatprep.subr.mxu0 0.0
  %11286 = vmatpush1.msra.mxu0 0.0
  %11287 = vmatprep.subr.mxu0 0.0
  %11288 = vmatpush1.msra.mxu0 0.0
  %11289 = vmatprep.subr.mxu0 0.0
  %11290 = vmatpush1.msra.mxu0 0.0
  %11291 = vmatprep.subr.mxu0 0.0
  %11292 = vmatpush1.msra.mxu0 0.0
  %11293 = vmatprep.subr.mxu0 0.0
  %11294 = vmatpush1.msra.mxu0 0.0
  %11295 = vmatprep.subr.mxu0 0.0
  %11296 = vmatpush1.msra.mxu0 0.0
  %11297 = vmatprep.subr.mxu0 0.0
  %11298 = vmatpush1.msra.mxu0 0.0
  %11299 = vmatprep.subr.mxu0 0.0
  %11300 = vmatpush1.msra.mxu0 0.0
  %11301 = vmatprep.subr.mxu0 0.0
  %11302 = vmatpush1.msra.mxu0 0.0
  %11303 = vmatprep.subr.mxu0 0.0
  %11304 = vmatpush1.msra.mxu0 0.0
  %11305 = vmatprep.subr.mxu0 0.0
  %11306 = vmatpush1.msra.mxu0 0.0
  %11307 = vmatprep.subr.mxu0 0.0
  %11308 = vmatpush1.msra.mxu0 0.0
  %11309 = vmatprep.subr.mxu0 0.0
  %11310 = vmatpush1.msra.mxu0 0.0
  %11311 = vmatprep.subr.mxu0 0.0
  %11312 = vmatpush1.msra.mxu0 0.0
  %11313 = vmatprep.subr.mxu0 0.0
  %11314 = vmatpush1.msra.mxu0 0.0
  %11315 = vmatprep.subr.mxu0 0.0
  %11316 = vmatpush1.msra.mxu0 0.0
  %11317 = vmatprep.subr.mxu0 0.0
  %11318 = vmatpush1.msra.mxu0 0.0
  %11319 = vmatprep.subr.mxu0 0.0
  %11320 = vmatpush1.msra.mxu0 0.0
  %11321 = vmatprep.mubr.f32.mxu0 0.0
  %11322 = vmatmul.mubr.f32.gmra.mrb[0].mxu0 %v11179
  %v11323 = vpop.f32.mrb[0].mxu0
  %v11324 = vadd.f32 0.0, %v11323
  %v11325 = vpop.f32.mrb[0].mxu0
  %v11326 = vadd.f32 0.0, %v11325
  %11327 = vdwg.mxu0
  %11328 = vmatprep.subr.mxu0 %v11187
  %11329 = vmatpush1.msra.mxu0 %v11185
  %11330 = vmatprep.subr.mxu0 0.0
  %11331 = vmatpush1.msra.mxu0 0.0
  %11332 = vmatprep.subr.mxu0 0.0
  %11333 = vmatpush1.msra.mxu0 0.0
  %11334 = vmatprep.subr.mxu0 0.0
  %11335 = vmatpush1.msra.mxu0 0.0
  %11336 = vmatprep.subr.mxu0 0.0
  %11337 = vmatpush1.msra.mxu0 0.0
  %11338 = vmatprep.subr.mxu0 0.0
  %11339 = vmatpush1.msra.mxu0 0.0
  %11340 = vmatprep.subr.mxu0 0.0
  %11341 = vmatpush1.msra.mxu0 0.0
  %11342 = vmatprep.subr.mxu0 0.0
  %11343 = vmatpush1.msra.mxu0 0.0
  %11344 = vmatprep.subr.mxu0 0.0
  %11345 = vmatpush1.msra.mxu0 0.0
  %11346 = vmatprep.subr.mxu0 0.0
  %11347 = vmatpush1.msra.mxu0 0.0
  %11348 = vmatprep.subr.mxu0 0.0
  %11349 = vmatpush1.msra.mxu0 0.0
  %11350 = vmatprep.subr.mxu0 0.0
  %11351 = vmatpush1.msra.mxu0 0.0
  %11352 = vmatprep.subr.mxu0 0.0
  %11353 = vmatpush1.msra.mxu0 0.0
  %11354 = vmatprep.subr.mxu0 0.0
  %11355 = vmatpush1.msra.mxu0 0.0
  %11356 = vmatprep.subr.mxu0 0.0
  %11357 = vmatpush1.msra.mxu0 0.0
  %11358 = vmatprep.subr.mxu0 0.0
  %11359 = vmatpush1.msra.mxu0 0.0
  %11360 = vmatprep.subr.mxu0 0.0
  %11361 = vmatpush1.msra.mxu0 0.0
  %11362 = vmatprep.subr.mxu0 0.0
  %11363 = vmatpush1.msra.mxu0 0.0
  %11364 = vmatprep.subr.mxu0 0.0
  %11365 = vmatpush1.msra.mxu0 0.0
  %11366 = vmatprep.subr.mxu0 0.0
  %11367 = vmatpush1.msra.mxu0 0.0
  %11368 = vmatprep.subr.mxu0 0.0
  %11369 = vmatpush1.msra.mxu0 0.0
  %11370 = vmatprep.subr.mxu0 0.0
  %11371 = vmatpush1.msra.mxu0 0.0
  %11372 = vmatprep.subr.mxu0 0.0
  %11373 = vmatpush1.msra.mxu0 0.0
  %11374 = vmatprep.subr.mxu0 0.0
  %11375 = vmatpush1.msra.mxu0 0.0
  %11376 = vmatprep.subr.mxu0 0.0
  %11377 = vmatpush1.msra.mxu0 0.0
  %11378 = vmatprep.subr.mxu0 0.0
  %11379 = vmatpush1.msra.mxu0 0.0
  %11380 = vmatprep.subr.mxu0 0.0
  %11381 = vmatpush1.msra.mxu0 0.0
  %11382 = vmatprep.subr.mxu0 0.0
  %11383 = vmatpush1.msra.mxu0 0.0
  %11384 = vmatprep.subr.mxu0 0.0
  %11385 = vmatpush1.msra.mxu0 0.0
  %11386 = vmatprep.subr.mxu0 0.0
  %11387 = vmatpush1.msra.mxu0 0.0
  %11388 = vmatprep.subr.mxu0 0.0
  %11389 = vmatpush1.msra.mxu0 0.0
  %11390 = vmatprep.subr.mxu0 0.0
  %11391 = vmatpush1.msra.mxu0 0.0
  %11392 = vmatprep.mubr.f32.mxu0 0.0
  %11393 = vmatmul.mubr.f32.gmra.mrb[0].mxu0 %v11179
  %v11394 = vpop.f32.mrb[0].mxu0
  %v11395 = vadd.f32 0.0, %v11394
  %v11396 = vpop.f32.mrb[0].mxu0
  %v11397 = vadd.f32 0.0, %v11396
  %11398 = vdwg.mxu0
  %11399 = vmatprep.subr.mxu0 %v11191
  %11400 = vmatpush1.msra.mxu0 %v11189
  %11401 = vmatprep.subr.mxu0 0.0
  %11402 = vmatpush1.msra.mxu0 0.0
  %11403 = vmatprep.subr.mxu0 0.0
  %11404 = vmatpush1.msra.mxu0 0.0
  %11405 = vmatprep.subr.mxu0 0.0
  %11406 = vmatpush1.msra.mxu0 0.0
  %11407 = vmatprep.subr.mxu0 0.0
  %11408 = vmatpush1.msra.mxu0 0.0
  %11409 = vmatprep.subr.mxu0 0.0
  %11410 = vmatpush1.msra.mxu0 0.0
  %11411 = vmatprep.subr.mxu0 0.0
  %11412 = vmatpush1.msra.mxu0 0.0
  %11413 = vmatprep.subr.mxu0 0.0
  %11414 = vmatpush1.msra.mxu0 0.0
  %11415 = vmatprep.subr.mxu0 0.0
  %11416 = vmatpush1.msra.mxu0 0.0
  %11417 = vmatprep.subr.mxu0 0.0
  %11418 = vmatpush1.msra.mxu0 0.0
  %11419 = vmatprep.subr.mxu0 0.0
  %11420 = vmatpush1.msra.mxu0 0.0
  %11421 = vmatprep.subr.mxu0 0.0
  %11422 = vmatpush1.msra.mxu0 0.0
  %11423 = vmatprep.subr.mxu0 0.0
  %11424 = vmatpush1.msra.mxu0 0.0
  %11425 = vmatprep.subr.mxu0 0.0
  %11426 = vmatpush1.msra.mxu0 0.0
  %11427 = vmatprep.subr.mxu0 0.0
  %11428 = vmatpush1.msra.mxu0 0.0
  %11429 = vmatprep.subr.mxu0 0.0
  %11430 = vmatpush1.msra.mxu0 0.0
  %11431 = vmatprep.subr.mxu0 0.0
  %11432 = vmatpush1.msra.mxu0 0.0
  %11433 = vmatprep.subr.mxu0 0.0
  %11434 = vmatpush1.msra.mxu0 0.0
  %11435 = vmatprep.subr.mxu0 0.0
  %11436 = vmatpush1.msra.mxu0 0.0
  %11437 = vmatprep.subr.mxu0 0.0
  %11438 = vmatpush1.msra.mxu0 0.0
  %11439 = vmatprep.subr.mxu0 0.0
  %11440 = vmatpush1.msra.mxu0 0.0
  %11441 = vmatprep.subr.mxu0 0.0
  %11442 = vmatpush1.msra.mxu0 0.0
  %11443 = vmatprep.subr.mxu0 0.0
  %11444 = vmatpush1.msra.mxu0 0.0
  %11445 = vmatprep.subr.mxu0 0.0
  %11446 = vmatpush1.msra.mxu0 0.0
  %11447 = vmatprep.subr.mxu0 0.0
  %11448 = vmatpush1.msra.mxu0 0.0
  %11449 = vmatprep.subr.mxu0 0.0
  %11450 = vmatpush1.msra.mxu0 0.0
  %11451 = vmatprep.subr.mxu0 0.0
  %11452 = vmatpush1.msra.mxu0 0.0
  %11453 = vmatprep.subr.mxu0 0.0
  %11454 = vmatpush1.msra.mxu0 0.0
  %11455 = vmatprep.subr.mxu0 0.0
  %11456 = vmatpush1.msra.mxu0 0.0
  %11457 = vmatprep.subr.mxu0 0.0
  %11458 = vmatpush1.msra.mxu0 0.0
  %11459 = vmatprep.subr.mxu0 0.0
  %11460 = vmatpush1.msra.mxu0 0.0
  %11461 = vmatprep.subr.mxu0 0.0
  %11462 = vmatpush1.msra.mxu0 0.0
  %11463 = vmatprep.mubr.f32.mxu0 0.0
  %11464 = vmatmul.mubr.f32.gmra.mrb[0].mxu0 %v11179
  %v11465 = vpop.f32.mrb[0].mxu0
  %v11466 = vadd.f32 0.0, %v11465
  %v11467 = vpop.f32.mrb[0].mxu0
  %v11468 = vadd.f32 0.0, %v11467
  %11469 = vdwg.mxu0
  %11470 = vmatprep.subr.mxu0 %v11195
  %11471 = vmatpush1.msra.mxu0 %v11193
  %11472 = vmatprep.subr.mxu0 0.0
  %11473 = vmatpush1.msra.mxu0 0.0
  %11474 = vmatprep.subr.mxu0 0.0
  %11475 = vmatpush1.msra.mxu0 0.0
  %11476 = vmatprep.subr.mxu0 0.0
  %11477 = vmatpush1.msra.mxu0 0.0
  %11478 = vmatprep.subr.mxu0 0.0
  %11479 = vmatpush1.msra.mxu0 0.0
  %11480 = vmatprep.subr.mxu0 0.0
  %11481 = vmatpush1.msra.mxu0 0.0
  %11482 = vmatprep.subr.mxu0 0.0
  %11483 = vmatpush1.msra.mxu0 0.0
  %11484 = vmatprep.subr.mxu0 0.0
  %11485 = vmatpush1.msra.mxu0 0.0
  %11486 = vmatprep.subr.mxu0 0.0
  %11487 = vmatpush1.msra.mxu0 0.0
  %11488 = vmatprep.subr.mxu0 0.0
  %11489 = vmatpush1.msra.mxu0 0.0
  %11490 = vmatprep.subr.mxu0 0.0
  %11491 = vmatpush1.msra.mxu0 0.0
  %11492 = vmatprep.subr.mxu0 0.0
  %11493 = vmatpush1.msra.mxu0 0.0
  %11494 = vmatprep.subr.mxu0 0.0
  %11495 = vmatpush1.msra.mxu0 0.0
  %11496 = vmatprep.subr.mxu0 0.0
  %11497 = vmatpush1.msra.mxu0 0.0
  %11498 = vmatprep.subr.mxu0 0.0
  %11499 = vmatpush1.msra.mxu0 0.0
  %11500 = vmatprep.subr.mxu0 0.0
  %11501 = vmatpush1.msra.mxu0 0.0
  %11502 = vmatprep.subr.mxu0 0.0
  %11503 = vmatpush1.msra.mxu0 0.0
  %11504 = vmatprep.subr.mxu0 0.0
  %11505 = vmatpush1.msra.mxu0 0.0
  %11506 = vmatprep.subr.mxu0 0.0
  %11507 = vmatpush1.msra.mxu0 0.0
  %11508 = vmatprep.subr.mxu0 0.0
  %11509 = vmatpush1.msra.mxu0 0.0
  %11510 = vmatprep.subr.mxu0 0.0
  %11511 = vmatpush1.msra.mxu0 0.0
  %11512 = vmatprep.subr.mxu0 0.0
  %11513 = vmatpush1.msra.mxu0 0.0
  %11514 = vmatprep.subr.mxu0 0.0
  %11515 = vmatpush1.msra.mxu0 0.0
  %11516 = vmatprep.subr.mxu0 0.0
  %11517 = vmatpush1.msra.mxu0 0.0
  %11518 = vmatprep.subr.mxu0 0.0
  %11519 = vmatpush1.msra.mxu0 0.0
  %11520 = vmatprep.subr.mxu0 0.0
  %11521 = vmatpush1.msra.mxu0 0.0
  %11522 = vmatprep.subr.mxu0 0.0
  %11523 = vmatpush1.msra.mxu0 0.0
  %11524 = vmatprep.subr.mxu0 0.0
  %11525 = vmatpush1.msra.mxu0 0.0
  %11526 = vmatprep.subr.mxu0 0.0
  %11527 = vmatpush1.msra.mxu0 0.0
  %11528 = vmatprep.subr.mxu0 0.0
  %11529 = vmatpush1.msra.mxu0 0.0
  %11530 = vmatprep.subr.mxu0 0.0
  %11531 = vmatpush1.msra.mxu0 0.0
  %11532 = vmatprep.subr.mxu0 0.0
  %11533 = vmatpush1.msra.mxu0 0.0
  %11534 = vmatprep.mubr.f32.mxu0 0.0
  %11535 = vmatmul.mubr.f32.gmra.mrb[0].mxu0 %v11179
  %v11536 = vpop.f32.mrb[0].mxu0
  %v11537 = vadd.f32 0.0, %v11536
  %v11538 = vpop.f32.mrb[0].mxu0
  %v11539 = vadd.f32 0.0, %v11538
  %11540 = vdwg.mxu0
  %11541 = vmatprep.subr.mxu0 %v11199
  %11542 = vmatpush1.msra.mxu0 %v11197
  %11543 = vmatprep.subr.mxu0 0.0
  %11544 = vmatpush1.msra.mxu0 0.0
  %11545 = vmatprep.subr.mxu0 0.0
  %11546 = vmatpush1.msra.mxu0 0.0
  %11547 = vmatprep.subr.mxu0 0.0
  %11548 = vmatpush1.msra.mxu0 0.0
  %11549 = vmatprep.subr.mxu0 0.0
  %11550 = vmatpush1.msra.mxu0 0.0
  %11551 = vmatprep.subr.mxu0 0.0
  %11552 = vmatpush1.msra.mxu0 0.0
  %11553 = vmatprep.subr.mxu0 0.0
  %11554 = vmatpush1.msra.mxu0 0.0
  %11555 = vmatprep.subr.mxu0 0.0
  %11556 = vmatpush1.msra.mxu0 0.0
  %11557 = vmatprep.subr.mxu0 0.0
  %11558 = vmatpush1.msra.mxu0 0.0
  %11559 = vmatprep.subr.mxu0 0.0
  %11560 = vmatpush1.msra.mxu0 0.0
  %11561 = vmatprep.subr.mxu0 0.0
  %11562 = vmatpush1.msra.mxu0 0.0
  %11563 = vmatprep.subr.mxu0 0.0
  %11564 = vmatpush1.msra.mxu0 0.0
  %11565 = vmatprep.subr.mxu0 0.0
  %11566 = vmatpush1.msra.mxu0 0.0
  %11567 = vmatprep.subr.mxu0 0.0
  %11568 = vmatpush1.msra.mxu0 0.0
  %11569 = vmatprep.subr.mxu0 0.0
  %11570 = vmatpush1.msra.mxu0 0.0
  %11571 = vmatprep.subr.mxu0 0.0
  %11572 = vmatpush1.msra.mxu0 0.0
  %11573 = vmatprep.subr.mxu0 0.0
  %11574 = vmatpush1.msra.mxu0 0.0
  %11575 = vmatprep.subr.mxu0 0.0
  %11576 = vmatpush1.msra.mxu0 0.0
  %11577 = vmatprep.subr.mxu0 0.0
  %11578 = vmatpush1.msra.mxu0 0.0
  %11579 = vmatprep.subr.mxu0 0.0
  %11580 = vmatpush1.msra.mxu0 0.0
  %11581 = vmatprep.subr.mxu0 0.0
  %11582 = vmatpush1.msra.mxu0 0.0
  %11583 = vmatprep.subr.mxu0 0.0
  %11584 = vmatpush1.msra.mxu0 0.0
  %11585 = vmatprep.subr.mxu0 0.0
  %11586 = vmatpush1.msra.mxu0 0.0
  %11587 = vmatprep.subr.mxu0 0.0
  %11588 = vmatpush1.msra.mxu0 0.0
  %11589 = vmatprep.subr.mxu0 0.0
  %11590 = vmatpush1.msra.mxu0 0.0
  %11591 = vmatprep.subr.mxu0 0.0
  %11592 = vmatpush1.msra.mxu0 0.0
  %11593 = vmatprep.subr.mxu0 0.0
  %11594 = vmatpush1.msra.mxu0 0.0
  %11595 = vmatprep.subr.mxu0 0.0
  %11596 = vmatpush1.msra.mxu0 0.0
  %11597 = vmatprep.subr.mxu0 0.0
  %11598 = vmatpush1.msra.mxu0 0.0
  %11599 = vmatprep.subr.mxu0 0.0
  %11600 = vmatpush1.msra.mxu0 0.0
  %11601 = vmatprep.subr.mxu0 0.0
  %11602 = vmatpush1.msra.mxu0 0.0
  %11603 = vmatprep.subr.mxu0 0.0
  %11604 = vmatpush1.msra.mxu0 0.0
  %11605 = vmatprep.mubr.f32.mxu0 0.0
  %11606 = vmatmul.mubr.f32.gmra.mrb[0].mxu0 %v11179
  %v11607 = vpop.f32.mrb[0].mxu0
  %v11608 = vadd.f32 0.0, %v11607
  %v11609 = vpop.f32.mrb[0].mxu0
  %v11610 = vadd.f32 0.0, %v11609
  %11611 = vdwg.mxu0
  %11612 = vmatprep.subr.mxu0 %v11203
  %11613 = vmatpush1.msra.mxu0 %v11201
  %11614 = vmatprep.subr.mxu0 0.0
  %11615 = vmatpush1.msra.mxu0 0.0
  %11616 = vmatprep.subr.mxu0 0.0
  %11617 = vmatpush1.msra.mxu0 0.0
  %11618 = vmatprep.subr.mxu0 0.0
  %11619 = vmatpush1.msra.mxu0 0.0
  %11620 = vmatprep.subr.mxu0 0.0
  %11621 = vmatpush1.msra.mxu0 0.0
  %11622 = vmatprep.subr.mxu0 0.0
  %11623 = vmatpush1.msra.mxu0 0.0
  %11624 = vmatprep.subr.mxu0 0.0
  %11625 = vmatpush1.msra.mxu0 0.0
  %11626 = vmatprep.subr.mxu0 0.0
  %11627 = vmatpush1.msra.mxu0 0.0
  %11628 = vmatprep.subr.mxu0 0.0
  %11629 = vmatpush1.msra.mxu0 0.0
  %11630 = vmatprep.subr.mxu0 0.0
  %11631 = vmatpush1.msra.mxu0 0.0
  %11632 = vmatprep.subr.mxu0 0.0
  %11633 = vmatpush1.msra.mxu0 0.0
  %11634 = vmatprep.subr.mxu0 0.0
  %11635 = vmatpush1.msra.mxu0 0.0
  %11636 = vmatprep.subr.mxu0 0.0
  %11637 = vmatpush1.msra.mxu0 0.0
  %11638 = vmatprep.subr.mxu0 0.0
  %11639 = vmatpush1.msra.mxu0 0.0
  %11640 = vmatprep.subr.mxu0 0.0
  %11641 = vmatpush1.msra.mxu0 0.0
  %11642 = vmatprep.subr.mxu0 0.0
  %11643 = vmatpush1.msra.mxu0 0.0
  %11644 = vmatprep.subr.mxu0 0.0
  %11645 = vmatpush1.msra.mxu0 0.0
  %11646 = vmatprep.subr.mxu0 0.0
  %11647 = vmatpush1.msra.mxu0 0.0
  %11648 = vmatprep.subr.mxu0 0.0
  %11649 = vmatpush1.msra.mxu0 0.0
  %11650 = vmatprep.subr.mxu0 0.0
  %11651 = vmatpush1.msra.mxu0 0.0
  %11652 = vmatprep.subr.mxu0 0.0
  %11653 = vmatpush1.msra.mxu0 0.0
  %11654 = vmatprep.subr.mxu0 0.0
  %11655 = vmatpush1.msra.mxu0 0.0
  %11656 = vmatprep.subr.mxu0 0.0
  %11657 = vmatpush1.msra.mxu0 0.0
  %11658 = vmatprep.subr.mxu0 0.0
  %11659 = vmatpush1.msra.mxu0 0.0
  %11660 = vmatprep.subr.mxu0 0.0
  %11661 = vmatpush1.msra.mxu0 0.0
  %11662 = vmatprep.subr.mxu0 0.0
  %11663 = vmatpush1.msra.mxu0 0.0
  %11664 = vmatprep.subr.mxu0 0.0
  %11665 = vmatpush1.msra.mxu0 0.0
  %11666 = vmatprep.subr.mxu0 0.0
  %11667 = vmatpush1.msra.mxu0 0.0
  %11668 = vmatprep.subr.mxu0 0.0
  %11669 = vmatpush1.msra.mxu0 0.0
  %11670 = vmatprep.subr.mxu0 0.0
  %11671 = vmatpush1.msra.mxu0 0.0
  %11672 = vmatprep.subr.mxu0 0.0
  %11673 = vmatpush1.msra.mxu0 0.0
  %11674 = vmatprep.subr.mxu0 0.0
  %11675 = vmatpush1.msra.mxu0 0.0
  %11676 = vmatprep.mubr.f32.mxu0 0.0
  %11677 = vmatmul.mubr.f32.gmra.mrb[0].mxu0 %v11179
  %v11678 = vpop.f32.mrb[0].mxu0
  %v11679 = vadd.f32 0.0, %v11678
  %v11680 = vpop.f32.mrb[0].mxu0
  %v11681 = vadd.f32 0.0, %v11680
  %11682 = vdwg.mxu0
  %11683 = vmatprep.subr.mxu0 %v11207
  %11684 = vmatpush1.msra.mxu0 %v11205
  %11685 = vmatprep.subr.mxu0 0.0
  %11686 = vmatpush1.msra.mxu0 0.0
  %11687 = vmatprep.subr.mxu0 0.0
  %11688 = vmatpush1.msra.mxu0 0.0
  %11689 = vmatprep.subr.mxu0 0.0
  %11690 = vmatpush1.msra.mxu0 0.0
  %11691 = vmatprep.subr.mxu0 0.0
  %11692 = vmatpush1.msra.mxu0 0.0
  %11693 = vmatprep.subr.mxu0 0.0
  %11694 = vmatpush1.msra.mxu0 0.0
  %11695 = vmatprep.subr.mxu0 0.0
  %11696 = vmatpush1.msra.mxu0 0.0
  %11697 = vmatprep.subr.mxu0 0.0
  %11698 = vmatpush1.msra.mxu0 0.0
  %11699 = vmatprep.subr.mxu0 0.0
  %11700 = vmatpush1.msra.mxu0 0.0
  %11701 = vmatprep.subr.mxu0 0.0
  %11702 = vmatpush1.msra.mxu0 0.0
  %11703 = vmatprep.subr.mxu0 0.0
  %11704 = vmatpush1.msra.mxu0 0.0
  %11705 = vmatprep.subr.mxu0 0.0
  %11706 = vmatpush1.msra.mxu0 0.0
  %11707 = vmatprep.subr.mxu0 0.0
  %11708 = vmatpush1.msra.mxu0 0.0
  %11709 = vmatprep.subr.mxu0 0.0
  %11710 = vmatpush1.msra.mxu0 0.0
  %11711 = vmatprep.subr.mxu0 0.0
  %11712 = vmatpush1.msra.mxu0 0.0
  %11713 = vmatprep.subr.mxu0 0.0
  %11714 = vmatpush1.msra.mxu0 0.0
  %11715 = vmatprep.subr.mxu0 0.0
  %11716 = vmatpush1.msra.mxu0 0.0
  %11717 = vmatprep.subr.mxu0 0.0
  %11718 = vmatpush1.msra.mxu0 0.0
  %11719 = vmatprep.subr.mxu0 0.0
  %11720 = vmatpush1.msra.mxu0 0.0
  %11721 = vmatprep.subr.mxu0 0.0
  %11722 = vmatpush1.msra.mxu0 0.0
  %11723 = vmatprep.subr.mxu0 0.0
  %11724 = vmatpush1.msra.mxu0 0.0
  %11725 = vmatprep.subr.mxu0 0.0
  %11726 = vmatpush1.msra.mxu0 0.0
  %11727 = vmatprep.subr.mxu0 0.0
  %11728 = vmatpush1.msra.mxu0 0.0
  %11729 = vmatprep.subr.mxu0 0.0
  %11730 = vmatpush1.msra.mxu0 0.0
  %11731 = vmatprep.subr.mxu0 0.0
  %11732 = vmatpush1.msra.mxu0 0.0
  %11733 = vmatprep.subr.mxu0 0.0
  %11734 = vmatpush1.msra.mxu0 0.0
  %11735 = vmatprep.subr.mxu0 0.0
  %11736 = vmatpush1.msra.mxu0 0.0
  %11737 = vmatprep.subr.mxu0 0.0
  %11738 = vmatpush1.msra.mxu0 0.0
  %11739 = vmatprep.subr.mxu0 0.0
  %11740 = vmatpush1.msra.mxu0 0.0
  %11741 = vmatprep.subr.mxu0 0.0
  %11742 = vmatpush1.msra.mxu0 0.0
  %11743 = vmatprep.subr.mxu0 0.0
  %11744 = vmatpush1.msra.mxu0 0.0
  %11745 = vmatprep.subr.mxu0 0.0
  %11746 = vmatpush1.msra.mxu0 0.0
  %11747 = vmatprep.mubr.f32.mxu0 0.0
  %11748 = vmatmul.mubr.f32.gmra.mrb[0].mxu0 %v11179
  %v11749 = vpop.f32.mrb[0].mxu0
  %v11750 = vadd.f32 0.0, %v11749
  %v11751 = vpop.f32.mrb[0].mxu0
  %v11752 = vadd.f32 0.0, %v11751
  %11753 = vdwg.mxu0
  %11754 = vmatprep.subr.mxu0 %v11211
  %11755 = vmatpush1.msra.mxu0 %v11209
  %11756 = vmatprep.subr.mxu0 0.0
  %11757 = vmatpush1.msra.mxu0 0.0
  %11758 = vmatprep.subr.mxu0 0.0
  %11759 = vmatpush1.msra.mxu0 0.0
  %11760 = vmatprep.subr.mxu0 0.0
  %11761 = vmatpush1.msra.mxu0 0.0
  %11762 = vmatprep.subr.mxu0 0.0
  %11763 = vmatpush1.msra.mxu0 0.0
  %11764 = vmatprep.subr.mxu0 0.0
  %11765 = vmatpush1.msra.mxu0 0.0
  %11766 = vmatprep.subr.mxu0 0.0
  %11767 = vmatpush1.msra.mxu0 0.0
  %11768 = vmatprep.subr.mxu0 0.0
  %11769 = vmatpush1.msra.mxu0 0.0
  %11770 = vmatprep.subr.mxu0 0.0
  %11771 = vmatpush1.msra.mxu0 0.0
  %11772 = vmatprep.subr.mxu0 0.0
  %11773 = vmatpush1.msra.mxu0 0.0
  %11774 = vmatprep.subr.mxu0 0.0
  %11775 = vmatpush1.msra.mxu0 0.0
  %11776 = vmatprep.subr.mxu0 0.0
  %11777 = vmatpush1.msra.mxu0 0.0
  %11778 = vmatprep.subr.mxu0 0.0
  %11779 = vmatpush1.msra.mxu0 0.0
  %11780 = vmatprep.subr.mxu0 0.0
  %11781 = vmatpush1.msra.mxu0 0.0
  %11782 = vmatprep.subr.mxu0 0.0
  %11783 = vmatpush1.msra.mxu0 0.0
  %11784 = vmatprep.subr.mxu0 0.0
  %11785 = vmatpush1.msra.mxu0 0.0
  %11786 = vmatprep.subr.mxu0 0.0
  %11787 = vmatpush1.msra.mxu0 0.0
  %11788 = vmatprep.subr.mxu0 0.0
  %11789 = vmatpush1.msra.mxu0 0.0
  %11790 = vmatprep.subr.mxu0 0.0
  %11791 = vmatpush1.msra.mxu0 0.0
  %11792 = vmatprep.subr.mxu0 0.0
  %11793 = vmatpush1.msra.mxu0 0.0
  %11794 = vmatprep.subr.mxu0 0.0
  %11795 = vmatpush1.msra.mxu0 0.0
  %11796 = vmatprep.subr.mxu0 0.0
  %11797 = vmatpush1.msra.mxu0 0.0
  %11798 = vmatprep.subr.mxu0 0.0
  %11799 = vmatpush1.msra.mxu0 0.0
  %11800 = vmatprep.subr.mxu0 0.0
  %11801 = vmatpush1.msra.mxu0 0.0
  %11802 = vmatprep.subr.mxu0 0.0
  %11803 = vmatpush1.msra.mxu0 0.0
  %11804 = vmatprep.subr.mxu0 0.0
  %11805 = vmatpush1.msra.mxu0 0.0
  %11806 = vmatprep.subr.mxu0 0.0
  %11807 = vmatpush1.msra.mxu0 0.0
  %11808 = vmatprep.subr.mxu0 0.0
  %11809 = vmatpush1.msra.mxu0 0.0
  %11810 = vmatprep.subr.mxu0 0.0
  %11811 = vmatpush1.msra.mxu0 0.0
  %11812 = vmatprep.subr.mxu0 0.0
  %11813 = vmatpush1.msra.mxu0 0.0
  %11814 = vmatprep.subr.mxu0 0.0
  %11815 = vmatpush1.msra.mxu0 0.0
  %11816 = vmatprep.subr.mxu0 0.0
  %11817 = vmatpush1.msra.mxu0 0.0
  %11818 = vmatprep.mubr.f32.mxu0 0.0
  %11819 = vmatmul.mubr.f32.gmra.mrb[0].mxu0 %v11179
  %v11820 = vpop.f32.mrb[0].mxu0
  %v11821 = vadd.f32 0.0, %v11820
  %v11822 = vpop.f32.mrb[0].mxu0
  %v11823 = vadd.f32 0.0, %v11822
  %11824 = vdwg.mxu0
  %11825 = vmatprep.subr.mxu0 %v11215
  %11826 = vmatpush1.msra.mxu0 %v11213
  %11827 = vmatprep.subr.mxu0 0.0
  %11828 = vmatpush1.msra.mxu0 0.0
  %11829 = vmatprep.subr.mxu0 0.0
  %11830 = vmatpush1.msra.mxu0 0.0
  %11831 = vmatprep.subr.mxu0 0.0
  %11832 = vmatpush1.msra.mxu0 0.0
  %11833 = vmatprep.subr.mxu0 0.0
  %11834 = vmatpush1.msra.mxu0 0.0
  %11835 = vmatprep.subr.mxu0 0.0
  %11836 = vmatpush1.msra.mxu0 0.0
  %11837 = vmatprep.subr.mxu0 0.0
  %11838 = vmatpush1.msra.mxu0 0.0
  %11839 = vmatprep.subr.mxu0 0.0
  %11840 = vmatpush1.msra.mxu0 0.0
  %11841 = vmatprep.subr.mxu0 0.0
  %11842 = vmatpush1.msra.mxu0 0.0
  %11843 = vmatprep.subr.mxu0 0.0
  %11844 = vmatpush1.msra.mxu0 0.0
  %11845 = vmatprep.subr.mxu0 0.0
  %11846 = vmatpush1.msra.mxu0 0.0
  %11847 = vmatprep.subr.mxu0 0.0
  %11848 = vmatpush1.msra.mxu0 0.0
  %11849 = vmatprep.subr.mxu0 0.0
  %11850 = vmatpush1.msra.mxu0 0.0
  %11851 = vmatprep.subr.mxu0 0.0
  %11852 = vmatpush1.msra.mxu0 0.0
  %11853 = vmatprep.subr.mxu0 0.0
  %11854 = vmatpush1.msra.mxu0 0.0
  %11855 = vmatprep.subr.mxu0 0.0
  %11856 = vmatpush1.msra.mxu0 0.0
  %11857 = vmatprep.subr.mxu0 0.0
  %11858 = vmatpush1.msra.mxu0 0.0
  %11859 = vmatprep.subr.mxu0 0.0
  %11860 = vmatpush1.msra.mxu0 0.0
  %11861 = vmatprep.subr.mxu0 0.0
  %11862 = vmatpush1.msra.mxu0 0.0
  %11863 = vmatprep.subr.mxu0 0.0
  %11864 = vmatpush1.msra.mxu0 0.0
  %11865 = vmatprep.subr.mxu0 0.0
  %11866 = vmatpush1.msra.mxu0 0.0
  %11867 = vmatprep.subr.mxu0 0.0
  %11868 = vmatpush1.msra.mxu0 0.0
  %11869 = vmatprep.subr.mxu0 0.0
  %11870 = vmatpush1.msra.mxu0 0.0
  %11871 = vmatprep.subr.mxu0 0.0
  %11872 = vmatpush1.msra.mxu0 0.0
  %11873 = vmatprep.subr.mxu0 0.0
  %11874 = vmatpush1.msra.mxu0 0.0
  %11875 = vmatprep.subr.mxu0 0.0
  %11876 = vmatpush1.msra.mxu0 0.0
  %11877 = vmatprep.subr.mxu0 0.0
  %11878 = vmatpush1.msra.mxu0 0.0
  %11879 = vmatprep.subr.mxu0 0.0
  %11880 = vmatpush1.msra.mxu0 0.0
  %11881 = vmatprep.subr.mxu0 0.0
  %11882 = vmatpush1.msra.mxu0 0.0
  %11883 = vmatprep.subr.mxu0 0.0
  %11884 = vmatpush1.msra.mxu0 0.0
  %11885 = vmatprep.subr.mxu0 0.0
  %11886 = vmatpush1.msra.mxu0 0.0
  %11887 = vmatprep.subr.mxu0 0.0
  %11888 = vmatpush1.msra.mxu0 0.0
  %11889 = vmatprep.mubr.f32.mxu0 0.0
  %11890 = vmatmul.mubr.f32.gmra.mrb[0].mxu0 %v11179
  %v11891 = vpop.f32.mrb[0].mxu0
  %v11892 = vadd.f32 0.0, %v11891
  %v11893 = vpop.f32.mrb[0].mxu0
  %v11894 = vadd.f32 0.0, %v11893
  %11895 = vdwg.mxu0
  %11896 = vmatprep.subr.mxu0 %v11219
  %11897 = vmatpush1.msra.mxu0 %v11217
  %11898 = vmatprep.subr.mxu0 0.0
  %11899 = vmatpush1.msra.mxu0 0.0
  %11900 = vmatprep.subr.mxu0 0.0
  %11901 = vmatpush1.msra.mxu0 0.0
  %11902 = vmatprep.subr.mxu0 0.0
  %11903 = vmatpush1.msra.mxu0 0.0
  %11904 = vmatprep.subr.mxu0 0.0
  %11905 = vmatpush1.msra.mxu0 0.0
  %11906 = vmatprep.subr.mxu0 0.0
  %11907 = vmatpush1.msra.mxu0 0.0
  %11908 = vmatprep.subr.mxu0 0.0
  %11909 = vmatpush1.msra.mxu0 0.0
  %11910 = vmatprep.subr.mxu0 0.0
  %11911 = vmatpush1.msra.mxu0 0.0
  %11912 = vmatprep.subr.mxu0 0.0
  %11913 = vmatpush1.msra.mxu0 0.0
  %11914 = vmatprep.subr.mxu0 0.0
  %11915 = vmatpush1.msra.mxu0 0.0
  %11916 = vmatprep.subr.mxu0 0.0
  %11917 = vmatpush1.msra.mxu0 0.0
  %11918 = vmatprep.subr.mxu0 0.0
  %11919 = vmatpush1.msra.mxu0 0.0
  %11920 = vmatprep.subr.mxu0 0.0
  %11921 = vmatpush1.msra.mxu0 0.0
  %11922 = vmatprep.subr.mxu0 0.0
  %11923 = vmatpush1.msra.mxu0 0.0
  %11924 = vmatprep.subr.mxu0 0.0
  %11925 = vmatpush1.msra.mxu0 0.0
  %11926 = vmatprep.subr.mxu0 0.0
  %11927 = vmatpush1.msra.mxu0 0.0
  %11928 = vmatprep.subr.mxu0 0.0
  %11929 = vmatpush1.msra.mxu0 0.0
  %11930 = vmatprep.subr.mxu0 0.0
  %11931 = vmatpush1.msra.mxu0 0.0
  %11932 = vmatprep.subr.mxu0 0.0
  %11933 = vmatpush1.msra.mxu0 0.0
  %11934 = vmatprep.subr.mxu0 0.0
  %11935 = vmatpush1.msra.mxu0 0.0
  %11936 = vmatprep.subr.mxu0 0.0
  %11937 = vmatpush1.msra.mxu0 0.0
  %11938 = vmatprep.subr.mxu0 0.0
  %11939 = vmatpush1.msra.mxu0 0.0
  %11940 = vmatprep.subr.mxu0 0.0
  %11941 = vmatpush1.msra.mxu0 0.0
  %11942 = vmatprep.subr.mxu0 0.0
  %11943 = vmatpush1.msra.mxu0 0.0
  %11944 = vmatprep.subr.mxu0 0.0
  %11945 = vmatpush1.msra.mxu0 0.0
  %11946 = vmatprep.subr.mxu0 0.0
  %11947 = vmatpush1.msra.mxu0 0.0
  %11948 = vmatprep.subr.mxu0 0.0
  %11949 = vmatpush1.msra.mxu0 0.0
  %11950 = vmatprep.subr.mxu0 0.0
  %11951 = vmatpush1.msra.mxu0 0.0
  %11952 = vmatprep.subr.mxu0 0.0
  %11953 = vmatpush1.msra.mxu0 0.0
  %11954 = vmatprep.subr.mxu0 0.0
  %11955 = vmatpush1.msra.mxu0 0.0
  %11956 = vmatprep.subr.mxu0 0.0
  %11957 = vmatpush1.msra.mxu0 0.0
  %11958 = vmatprep.subr.mxu0 0.0
  %11959 = vmatpush1.msra.mxu0 0.0
  %11960 = vmatprep.mubr.f32.mxu0 0.0
  %11961 = vmatmul.mubr.f32.gmra.mrb[0].mxu0 %v11179
  %v11962 = vpop.f32.mrb[0].mxu0
  %v11963 = vadd.f32 0.0, %v11962
  %v11964 = vpop.f32.mrb[0].mxu0
  %v11965 = vadd.f32 0.0, %v11964
  %11966 = vdwg.mxu0
  %11967 = vmatprep.subr.mxu0 %v11223
  %11968 = vmatpush1.msra.mxu0 %v11221
  %11969 = vmatprep.subr.mxu0 0.0
  %11970 = vmatpush1.msra.mxu0 0.0
  %11971 = vmatprep.subr.mxu0 0.0
  %11972 = vmatpush1.msra.mxu0 0.0
  %11973 = vmatprep.subr.mxu0 0.0
  %11974 = vmatpush1.msra.mxu0 0.0
  %11975 = vmatprep.subr.mxu0 0.0
  %11976 = vmatpush1.msra.mxu0 0.0
  %11977 = vmatprep.subr.mxu0 0.0
  %11978 = vmatpush1.msra.mxu0 0.0
  %11979 = vmatprep.subr.mxu0 0.0
  %11980 = vmatpush1.msra.mxu0 0.0
  %11981 = vmatprep.subr.mxu0 0.0
  %11982 = vmatpush1.msra.mxu0 0.0
  %11983 = vmatprep.subr.mxu0 0.0
  %11984 = vmatpush1.msra.mxu0 0.0
  %11985 = vmatprep.subr.mxu0 0.0
  %11986 = vmatpush1.msra.mxu0 0.0
  %11987 = vmatprep.subr.mxu0 0.0
  %11988 = vmatpush1.msra.mxu0 0.0
  %11989 = vmatprep.subr.mxu0 0.0
  %11990 = vmatpush1.msra.mxu0 0.0
  %11991 = vmatprep.subr.mxu0 0.0
  %11992 = vmatpush1.msra.mxu0 0.0
  %11993 = vmatprep.subr.mxu0 0.0
  %11994 = vmatpush1.msra.mxu0 0.0
  %11995 = vmatprep.subr.mxu0 0.0
  %11996 = vmatpush1.msra.mxu0 0.0
  %11997 = vmatprep.subr.mxu0 0.0
  %11998 = vmatpush1.msra.mxu0 0.0
  %11999 = vmatprep.subr.mxu0 0.0
  %12000 = vmatpush1.msra.mxu0 0.0
  %12001 = vmatprep.subr.mxu0 0.0
  %12002 = vmatpush1.msra.mxu0 0.0
  %12003 = vmatprep.subr.mxu0 0.0
  %12004 = vmatpush1.msra.mxu0 0.0
  %12005 = vmatprep.subr.mxu0 0.0
  %12006 = vmatpush1.msra.mxu0 0.0
  %12007 = vmatprep.subr.mxu0 0.0
  %12008 = vmatpush1.msra.mxu0 0.0
  %12009 = vmatprep.subr.mxu0 0.0
  %12010 = vmatpush1.msra.mxu0 0.0
  %12011 = vmatprep.subr.mxu0 0.0
  %12012 = vmatpush1.msra.mxu0 0.0
  %12013 = vmatprep.subr.mxu0 0.0
  %12014 = vmatpush1.msra.mxu0 0.0
  %12015 = vmatprep.subr.mxu0 0.0
  %12016 = vmatpush1.msra.mxu0 0.0
  %12017 = vmatprep.subr.mxu0 0.0
  %12018 = vmatpush1.msra.mxu0 0.0
  %12019 = vmatprep.subr.mxu0 0.0
  %12020 = vmatpush1.msra.mxu0 0.0
  %12021 = vmatprep.subr.mxu0 0.0
  %12022 = vmatpush1.msra.mxu0 0.0
  %12023 = vmatprep.subr.mxu0 0.0
  %12024 = vmatpush1.msra.mxu0 0.0
  %12025 = vmatprep.subr.mxu0 0.0
  %12026 = vmatpush1.msra.mxu0 0.0
  %12027 = vmatprep.subr.mxu0 0.0
  %12028 = vmatpush1.msra.mxu0 0.0
  %12029 = vmatprep.subr.mxu0 0.0
  %12030 = vmatpush1.msra.mxu0 0.0
  %12031 = vmatprep.mubr.f32.mxu0 0.0
  %12032 = vmatmul.mubr.f32.gmra.mrb[0].mxu0 %v11179
  %v12033 = vpop.f32.mrb[0].mxu0
  %v12034 = vadd.f32 0.0, %v12033
  %v12035 = vpop.f32.mrb[0].mxu0
  %v12036 = vadd.f32 0.0, %v12035
  %12037 = vdwg.mxu0
  %12038 = vmatprep.subr.mxu0 %v11227
  %12039 = vmatpush1.msra.mxu0 %v11225
  %12040 = vmatprep.subr.mxu0 0.0
  %12041 = vmatpush1.msra.mxu0 0.0
  %12042 = vmatprep.subr.mxu0 0.0
  %12043 = vmatpush1.msra.mxu0 0.0
  %12044 = vmatprep.subr.mxu0 0.0
  %12045 = vmatpush1.msra.mxu0 0.0
  %12046 = vmatprep.subr.mxu0 0.0
  %12047 = vmatpush1.msra.mxu0 0.0
  %12048 = vmatprep.subr.mxu0 0.0
  %12049 = vmatpush1.msra.mxu0 0.0
  %12050 = vmatprep.subr.mxu0 0.0
  %12051 = vmatpush1.msra.mxu0 0.0
  %12052 = vmatprep.subr.mxu0 0.0
  %12053 = vmatpush1.msra.mxu0 0.0
  %12054 = vmatprep.subr.mxu0 0.0
  %12055 = vmatpush1.msra.mxu0 0.0
  %12056 = vmatprep.subr.mxu0 0.0
  %12057 = vmatpush1.msra.mxu0 0.0
  %12058 = vmatprep.subr.mxu0 0.0
  %12059 = vmatpush1.msra.mxu0 0.0
  %12060 = vmatprep.subr.mxu0 0.0
  %12061 = vmatpush1.msra.mxu0 0.0
  %12062 = vmatprep.subr.mxu0 0.0
  %12063 = vmatpush1.msra.mxu0 0.0
  %12064 = vmatprep.subr.mxu0 0.0
  %12065 = vmatpush1.msra.mxu0 0.0
  %12066 = vmatprep.subr.mxu0 0.0
  %12067 = vmatpush1.msra.mxu0 0.0
  %12068 = vmatprep.subr.mxu0 0.0
  %12069 = vmatpush1.msra.mxu0 0.0
  %12070 = vmatprep.subr.mxu0 0.0
  %12071 = vmatpush1.msra.mxu0 0.0
  %12072 = vmatprep.subr.mxu0 0.0
  %12073 = vmatpush1.msra.mxu0 0.0
  %12074 = vmatprep.subr.mxu0 0.0
  %12075 = vmatpush1.msra.mxu0 0.0
  %12076 = vmatprep.subr.mxu0 0.0
  %12077 = vmatpush1.msra.mxu0 0.0
  %12078 = vmatprep.subr.mxu0 0.0
  %12079 = vmatpush1.msra.mxu0 0.0
  %12080 = vmatprep.subr.mxu0 0.0
  %12081 = vmatpush1.msra.mxu0 0.0
  %12082 = vmatprep.subr.mxu0 0.0
  %12083 = vmatpush1.msra.mxu0 0.0
  %12084 = vmatprep.subr.mxu0 0.0
  %12085 = vmatpush1.msra.mxu0 0.0
  %12086 = vmatprep.subr.mxu0 0.0
  %12087 = vmatpush1.msra.mxu0 0.0
  %12088 = vmatprep.subr.mxu0 0.0
  %12089 = vmatpush1.msra.mxu0 0.0
  %12090 = vmatprep.subr.mxu0 0.0
  %12091 = vmatpush1.msra.mxu0 0.0
  %12092 = vmatprep.subr.mxu0 0.0
  %12093 = vmatpush1.msra.mxu0 0.0
  %12094 = vmatprep.subr.mxu0 0.0
  %12095 = vmatpush1.msra.mxu0 0.0
  %12096 = vmatprep.subr.mxu0 0.0
  %12097 = vmatpush1.msra.mxu0 0.0
  %12098 = vmatprep.subr.mxu0 0.0
  %12099 = vmatpush1.msra.mxu0 0.0
  %12100 = vmatprep.subr.mxu0 0.0
  %12101 = vmatpush1.msra.mxu0 0.0
  %12102 = vmatprep.mubr.f32.mxu0 0.0
  %12103 = vmatmul.mubr.f32.gmra.mrb[0].mxu0 %v11179
  %v12104 = vpop.f32.mrb[0].mxu0
  %v12105 = vadd.f32 0.0, %v12104
  %v12106 = vpop.f32.mrb[0].mxu0
  %v12107 = vadd.f32 0.0, %v12106
  %12108 = vdwg.mxu0
  %12109 = vmatprep.subr.mxu0 %v11231
  %12110 = vmatpush1.msra.mxu0 %v11229
  %12111 = vmatprep.subr.mxu0 0.0
  %12112 = vmatpush1.msra.mxu0 0.0
  %12113 = vmatprep.subr.mxu0 0.0
  %12114 = vmatpush1.msra.mxu0 0.0
  %12115 = vmatprep.subr.mxu0 0.0
  %12116 = vmatpush1.msra.mxu0 0.0
  %12117 = vmatprep.subr.mxu0 0.0
  %12118 = vmatpush1.msra.mxu0 0.0
  %12119 = vmatprep.subr.mxu0 0.0
  %12120 = vmatpush1.msra.mxu0 0.0
  %12121 = vmatprep.subr.mxu0 0.0
  %12122 = vmatpush1.msra.mxu0 0.0
  %12123 = vmatprep.subr.mxu0 0.0
  %12124 = vmatpush1.msra.mxu0 0.0
  %12125 = vmatprep.subr.mxu0 0.0
  %12126 = vmatpush1.msra.mxu0 0.0
  %12127 = vmatprep.subr.mxu0 0.0
  %12128 = vmatpush1.msra.mxu0 0.0
  %12129 = vmatprep.subr.mxu0 0.0
  %12130 = vmatpush1.msra.mxu0 0.0
  %12131 = vmatprep.subr.mxu0 0.0
  %12132 = vmatpush1.msra.mxu0 0.0
  %12133 = vmatprep.subr.mxu0 0.0
  %12134 = vmatpush1.msra.mxu0 0.0
  %12135 = vmatprep.subr.mxu0 0.0
  %12136 = vmatpush1.msra.mxu0 0.0
  %12137 = vmatprep.subr.mxu0 0.0
  %12138 = vmatpush1.msra.mxu0 0.0
  %12139 = vmatprep.subr.mxu0 0.0
  %12140 = vmatpush1.msra.mxu0 0.0
  %12141 = vmatprep.subr.mxu0 0.0
  %12142 = vmatpush1.msra.mxu0 0.0
  %12143 = vmatprep.subr.mxu0 0.0
  %12144 = vmatpush1.msra.mxu0 0.0
  %12145 = vmatprep.subr.mxu0 0.0
  %12146 = vmatpush1.msra.mxu0 0.0
  %12147 = vmatprep.subr.mxu0 0.0
  %12148 = vmatpush1.msra.mxu0 0.0
  %12149 = vmatprep.subr.mxu0 0.0
  %12150 = vmatpush1.msra.mxu0 0.0
  %12151 = vmatprep.subr.mxu0 0.0
  %12152 = vmatpush1.msra.mxu0 0.0
  %12153 = vmatprep.subr.mxu0 0.0
  %12154 = vmatpush1.msra.mxu0 0.0
  %12155 = vmatprep.subr.mxu0 0.0
  %12156 = vmatpush1.msra.mxu0 0.0
  %12157 = vmatprep.subr.mxu0 0.0
  %12158 = vmatpush1.msra.mxu0 0.0
  %12159 = vmatprep.subr.mxu0 0.0
  %12160 = vmatpush1.msra.mxu0 0.0
  %12161 = vmatprep.subr.mxu0 0.0
  %12162 = vmatpush1.msra.mxu0 0.0
  %12163 = vmatprep.subr.mxu0 0.0
  %12164 = vmatpush1.msra.mxu0 0.0
  %12165 = vmatprep.subr.mxu0 0.0
  %12166 = vmatpush1.msra.mxu0 0.0
  %12167 = vmatprep.subr.mxu0 0.0
  %12168 = vmatpush1.msra.mxu0 0.0
  %12169 = vmatprep.subr.mxu0 0.0
  %12170 = vmatpush1.msra.mxu0 0.0
  %12171 = vmatprep.subr.mxu0 0.0
  %12172 = vmatpush1.msra.mxu0 0.0
  %12173 = vmatprep.mubr.f32.mxu0 0.0
  %12174 = vmatmul.mubr.f32.gmra.mrb[0].mxu0 %v11179
  %v12175 = vpop.f32.mrb[0].mxu0
  %v12176 = vadd.f32 0.0, %v12175
  %v12177 = vpop.f32.mrb[0].mxu0
  %v12178 = vadd.f32 0.0, %v12177
  %12179 = vdwg.mxu0
  %12180 = vmatprep.subr.mxu0 %v11235
  %12181 = vmatpush1.msra.mxu0 %v11233
  %12182 = vmatprep.subr.mxu0 0.0
  %12183 = vmatpush1.msra.mxu0 0.0
  %12184 = vmatprep.subr.mxu0 0.0
  %12185 = vmatpush1.msra.mxu0 0.0
  %12186 = vmatprep.subr.mxu0 0.0
  %12187 = vmatpush1.msra.mxu0 0.0
  %12188 = vmatprep.subr.mxu0 0.0
  %12189 = vmatpush1.msra.mxu0 0.0
  %12190 = vmatprep.subr.mxu0 0.0
  %12191 = vmatpush1.msra.mxu0 0.0
  %12192 = vmatprep.subr.mxu0 0.0
  %12193 = vmatpush1.msra.mxu0 0.0
  %12194 = vmatprep.subr.mxu0 0.0
  %12195 = vmatpush1.msra.mxu0 0.0
  %12196 = vmatprep.subr.mxu0 0.0
  %12197 = vmatpush1.msra.mxu0 0.0
  %12198 = vmatprep.subr.mxu0 0.0
  %12199 = vmatpush1.msra.mxu0 0.0
  %12200 = vmatprep.subr.mxu0 0.0
  %12201 = vmatpush1.msra.mxu0 0.0
  %12202 = vmatprep.subr.mxu0 0.0
  %12203 = vmatpush1.msra.mxu0 0.0
  %12204 = vmatprep.subr.mxu0 0.0
  %12205 = vmatpush1.msra.mxu0 0.0
  %12206 = vmatprep.subr.mxu0 0.0
  %12207 = vmatpush1.msra.mxu0 0.0
  %12208 = vmatprep.subr.mxu0 0.0
  %12209 = vmatpush1.msra.mxu0 0.0
  %12210 = vmatprep.subr.mxu0 0.0
  %12211 = vmatpush1.msra.mxu0 0.0
  %12212 = vmatprep.subr.mxu0 0.0
  %12213 = vmatpush1.msra.mxu0 0.0
  %12214 = vmatprep.subr.mxu0 0.0
  %12215 = vmatpush1.msra.mxu0 0.0
  %12216 = vmatprep.subr.mxu0 0.0
  %12217 = vmatpush1.msra.mxu0 0.0
  %12218 = vmatprep.subr.mxu0 0.0
  %12219 = vmatpush1.msra.mxu0 0.0
  %12220 = vmatprep.subr.mxu0 0.0
  %12221 = vmatpush1.msra.mxu0 0.0
  %12222 = vmatprep.subr.mxu0 0.0
  %12223 = vmatpush1.msra.mxu0 0.0
  %12224 = vmatprep.subr.mxu0 0.0
  %12225 = vmatpush1.msra.mxu0 0.0
  %12226 = vmatprep.subr.mxu0 0.0
  %12227 = vmatpush1.msra.mxu0 0.0
  %12228 = vmatprep.subr.mxu0 0.0
  %12229 = vmatpush1.msra.mxu0 0.0
  %12230 = vmatprep.subr.mxu0 0.0
  %12231 = vmatpush1.msra.mxu0 0.0
  %12232 = vmatprep.subr.mxu0 0.0
  %12233 = vmatpush1.msra.mxu0 0.0
  %12234 = vmatprep.subr.mxu0 0.0
  %12235 = vmatpush1.msra.mxu0 0.0
  %12236 = vmatprep.subr.mxu0 0.0
  %12237 = vmatpush1.msra.mxu0 0.0
  %12238 = vmatprep.subr.mxu0 0.0
  %12239 = vmatpush1.msra.mxu0 0.0
  %12240 = vmatprep.subr.mxu0 0.0
  %12241 = vmatpush1.msra.mxu0 0.0
  %12242 = vmatprep.subr.mxu0 0.0
  %12243 = vmatpush1.msra.mxu0 0.0
  %12244 = vmatprep.mubr.f32.mxu0 0.0
  %12245 = vmatmul.mubr.f32.gmra.mrb[0].mxu0 %v11179
  %v12246 = vpop.f32.mrb[0].mxu0
  %v12247 = vadd.f32 0.0, %v12246
  %v12248 = vpop.f32.mrb[0].mxu0
  %v12249 = vadd.f32 0.0, %v12248
  %12250 = vdwg.mxu0
  %12251 = vmatprep.subr.mxu0 %v11239
  %12252 = vmatpush1.msra.mxu0 %v11237
  %12253 = vmatprep.subr.mxu0 0.0
  %12254 = vmatpush1.msra.mxu0 0.0
  %12255 = vmatprep.subr.mxu0 0.0
  %12256 = vmatpush1.msra.mxu0 0.0
  %12257 = vmatprep.subr.mxu0 0.0
  %12258 = vmatpush1.msra.mxu0 0.0
  %12259 = vmatprep.subr.mxu0 0.0
  %12260 = vmatpush1.msra.mxu0 0.0
  %12261 = vmatprep.subr.mxu0 0.0
  %12262 = vmatpush1.msra.mxu0 0.0
  %12263 = vmatprep.subr.mxu0 0.0
  %12264 = vmatpush1.msra.mxu0 0.0
  %12265 = vmatprep.subr.mxu0 0.0
  %12266 = vmatpush1.msra.mxu0 0.0
  %12267 = vmatprep.subr.mxu0 0.0
  %12268 = vmatpush1.msra.mxu0 0.0
  %12269 = vmatprep.subr.mxu0 0.0
  %12270 = vmatpush1.msra.mxu0 0.0
  %12271 = vmatprep.subr.mxu0 0.0
  %12272 = vmatpush1.msra.mxu0 0.0
  %12273 = vmatprep.subr.mxu0 0.0
  %12274 = vmatpush1.msra.mxu0 0.0
  %12275 = vmatprep.subr.mxu0 0.0
  %12276 = vmatpush1.msra.mxu0 0.0
  %12277 = vmatprep.subr.mxu0 0.0
  %12278 = vmatpush1.msra.mxu0 0.0
  %12279 = vmatprep.subr.mxu0 0.0
  %12280 = vmatpush1.msra.mxu0 0.0
  %12281 = vmatprep.subr.mxu0 0.0
  %12282 = vmatpush1.msra.mxu0 0.0
  %12283 = vmatprep.subr.mxu0 0.0
  %12284 = vmatpush1.msra.mxu0 0.0
  %12285 = vmatprep.subr.mxu0 0.0
  %12286 = vmatpush1.msra.mxu0 0.0
  %12287 = vmatprep.subr.mxu0 0.0
  %12288 = vmatpush1.msra.mxu0 0.0
  %12289 = vmatprep.subr.mxu0 0.0
  %12290 = vmatpush1.msra.mxu0 0.0
  %12291 = vmatprep.subr.mxu0 0.0
  %12292 = vmatpush1.msra.mxu0 0.0
  %12293 = vmatprep.subr.mxu0 0.0
  %12294 = vmatpush1.msra.mxu0 0.0
  %12295 = vmatprep.subr.mxu0 0.0
  %12296 = vmatpush1.msra.mxu0 0.0
  %12297 = vmatprep.subr.mxu0 0.0
  %12298 = vmatpush1.msra.mxu0 0.0
  %12299 = vmatprep.subr.mxu0 0.0
  %12300 = vmatpush1.msra.mxu0 0.0
  %12301 = vmatprep.subr.mxu0 0.0
  %12302 = vmatpush1.msra.mxu0 0.0
  %12303 = vmatprep.subr.mxu0 0.0
  %12304 = vmatpush1.msra.mxu0 0.0
  %12305 = vmatprep.subr.mxu0 0.0
  %12306 = vmatpush1.msra.mxu0 0.0
  %12307 = vmatprep.subr.mxu0 0.0
  %12308 = vmatpush1.msra.mxu0 0.0
  %12309 = vmatprep.subr.mxu0 0.0
  %12310 = vmatpush1.msra.mxu0 0.0
  %12311 = vmatprep.subr.mxu0 0.0
  %12312 = vmatpush1.msra.mxu0 0.0
  %12313 = vmatprep.subr.mxu0 0.0
  %12314 = vmatpush1.msra.mxu0 0.0
  %12315 = vmatprep.mubr.f32.mxu0 0.0
  %12316 = vmatmul.mubr.f32.gmra.mrb[0].mxu0 %v11179
  %v12317 = vpop.f32.mrb[0].mxu0
  %v12318 = vadd.f32 0.0, %v12317
  %v12319 = vpop.f32.mrb[0].mxu0
  %v12320 = vadd.f32 0.0, %v12319
  %12321 = vdwg.mxu0
  %12322 = vmatprep.subr.mxu0 %v11243
  %12323 = vmatpush1.msra.mxu0 %v11241
  %12324 = vmatprep.subr.mxu0 0.0
  %12325 = vmatpush1.msra.mxu0 0.0
  %12326 = vmatprep.subr.mxu0 0.0
  %12327 = vmatpush1.msra.mxu0 0.0
  %12328 = vmatprep.subr.mxu0 0.0
  %12329 = vmatpush1.msra.mxu0 0.0
  %12330 = vmatprep.subr.mxu0 0.0
  %12331 = vmatpush1.msra.mxu0 0.0
  %12332 = vmatprep.subr.mxu0 0.0
  %12333 = vmatpush1.msra.mxu0 0.0
  %12334 = vmatprep.subr.mxu0 0.0
  %12335 = vmatpush1.msra.mxu0 0.0
  %12336 = vmatprep.subr.mxu0 0.0
  %12337 = vmatpush1.msra.mxu0 0.0
  %12338 = vmatprep.subr.mxu0 0.0
  %12339 = vmatpush1.msra.mxu0 0.0
  %12340 = vmatprep.subr.mxu0 0.0
  %12341 = vmatpush1.msra.mxu0 0.0
  %12342 = vmatprep.subr.mxu0 0.0
  %12343 = vmatpush1.msra.mxu0 0.0
  %12344 = vmatprep.subr.mxu0 0.0
  %12345 = vmatpush1.msra.mxu0 0.0
  %12346 = vmatprep.subr.mxu0 0.0
  %12347 = vmatpush1.msra.mxu0 0.0
  %12348 = vmatprep.subr.mxu0 0.0
  %12349 = vmatpush1.msra.mxu0 0.0
  %12350 = vmatprep.subr.mxu0 0.0
  %12351 = vmatpush1.msra.mxu0 0.0
  %12352 = vmatprep.subr.mxu0 0.0
  %12353 = vmatpush1.msra.mxu0 0.0
  %12354 = vmatprep.subr.mxu0 0.0
  %12355 = vmatpush1.msra.mxu0 0.0
  %12356 = vmatprep.subr.mxu0 0.0
  %12357 = vmatpush1.msra.mxu0 0.0
  %12358 = vmatprep.subr.mxu0 0.0
  %12359 = vmatpush1.msra.mxu0 0.0
  %12360 = vmatprep.subr.mxu0 0.0
  %12361 = vmatpush1.msra.mxu0 0.0
  %12362 = vmatprep.subr.mxu0 0.0
  %12363 = vmatpush1.msra.mxu0 0.0
  %12364 = vmatprep.subr.mxu0 0.0
  %12365 = vmatpush1.msra.mxu0 0.0
  %12366 = vmatprep.subr.mxu0 0.0
  %12367 = vmatpush1.msra.mxu0 0.0
  %12368 = vmatprep.subr.mxu0 0.0
  %12369 = vmatpush1.msra.mxu0 0.0
  %12370 = vmatprep.subr.mxu0 0.0
  %12371 = vmatpush1.msra.mxu0 0.0
  %12372 = vmatprep.subr.mxu0 0.0
  %12373 = vmatpush1.msra.mxu0 0.0
  %12374 = vmatprep.subr.mxu0 0.0
  %12375 = vmatpush1.msra.mxu0 0.0
  %12376 = vmatprep.subr.mxu0 0.0
  %12377 = vmatpush1.msra.mxu0 0.0
  %12378 = vmatprep.subr.mxu0 0.0
  %12379 = vmatpush1.msra.mxu0 0.0
  %12380 = vmatprep.subr.mxu0 0.0
  %12381 = vmatpush1.msra.mxu0 0.0
  %12382 = vmatprep.subr.mxu0 0.0
  %12383 = vmatpush1.msra.mxu0 0.0
  %12384 = vmatprep.subr.mxu0 0.0
  %12385 = vmatpush1.msra.mxu0 0.0
  %12386 = vmatprep.mubr.f32.mxu0 0.0
  %12387 = vmatmul.mubr.f32.gmra.mrb[0].mxu0 %v11179
  %v12388 = vpop.f32.mrb[0].mxu0
  %v12389 = vadd.f32 0.0, %v12388
  %v12390 = vpop.f32.mrb[0].mxu0
  %v12391 = vadd.f32 0.0, %v12390
  %12392 = vdwg.mxu0
  %12393 = vmatprep.subr.mxu0 %v11247
  %12394 = vmatpush1.msra.mxu0 %v11245
  %12395 = vmatprep.subr.mxu0 0.0
  %12396 = vmatpush1.msra.mxu0 0.0
  %12397 = vmatprep.subr.mxu0 0.0
  %12398 = vmatpush1.msra.mxu0 0.0
  %12399 = vmatprep.subr.mxu0 0.0
  %12400 = vmatpush1.msra.mxu0 0.0
  %12401 = vmatprep.subr.mxu0 0.0
  %12402 = vmatpush1.msra.mxu0 0.0
  %12403 = vmatprep.subr.mxu0 0.0
  %12404 = vmatpush1.msra.mxu0 0.0
  %12405 = vmatprep.subr.mxu0 0.0
  %12406 = vmatpush1.msra.mxu0 0.0
  %12407 = vmatprep.subr.mxu0 0.0
  %12408 = vmatpush1.msra.mxu0 0.0
  %12409 = vmatprep.subr.mxu0 0.0
  %12410 = vmatpush1.msra.mxu0 0.0
  %12411 = vmatprep.subr.mxu0 0.0
  %12412 = vmatpush1.msra.mxu0 0.0
  %12413 = vmatprep.subr.mxu0 0.0
  %12414 = vmatpush1.msra.mxu0 0.0
  %12415 = vmatprep.subr.mxu0 0.0
  %12416 = vmatpush1.msra.mxu0 0.0
  %12417 = vmatprep.subr.mxu0 0.0
  %12418 = vmatpush1.msra.mxu0 0.0
  %12419 = vmatprep.subr.mxu0 0.0
  %12420 = vmatpush1.msra.mxu0 0.0
  %12421 = vmatprep.subr.mxu0 0.0
  %12422 = vmatpush1.msra.mxu0 0.0
  %12423 = vmatprep.subr.mxu0 0.0
  %12424 = vmatpush1.msra.mxu0 0.0
  %12425 = vmatprep.subr.mxu0 0.0
  %12426 = vmatpush1.msra.mxu0 0.0
  %12427 = vmatprep.subr.mxu0 0.0
  %12428 = vmatpush1.msra.mxu0 0.0
  %12429 = vmatprep.subr.mxu0 0.0
  %12430 = vmatpush1.msra.mxu0 0.0
  %12431 = vmatprep.subr.mxu0 0.0
  %12432 = vmatpush1.msra.mxu0 0.0
  %12433 = vmatprep.subr.mxu0 0.0
  %12434 = vmatpush1.msra.mxu0 0.0
  %12435 = vmatprep.subr.mxu0 0.0
  %12436 = vmatpush1.msra.mxu0 0.0
  %12437 = vmatprep.subr.mxu0 0.0
  %12438 = vmatpush1.msra.mxu0 0.0
  %12439 = vmatprep.subr.mxu0 0.0
  %12440 = vmatpush1.msra.mxu0 0.0
  %12441 = vmatprep.subr.mxu0 0.0
  %12442 = vmatpush1.msra.mxu0 0.0
  %12443 = vmatprep.subr.mxu0 0.0
  %12444 = vmatpush1.msra.mxu0 0.0
  %12445 = vmatprep.subr.mxu0 0.0
  %12446 = vmatpush1.msra.mxu0 0.0
  %12447 = vmatprep.subr.mxu0 0.0
  %12448 = vmatpush1.msra.mxu0 0.0
  %12449 = vmatprep.subr.mxu0 0.0
  %12450 = vmatpush1.msra.mxu0 0.0
  %12451 = vmatprep.subr.mxu0 0.0
  %12452 = vmatpush1.msra.mxu0 0.0
  %12453 = vmatprep.subr.mxu0 0.0
  %12454 = vmatpush1.msra.mxu0 0.0
  %12455 = vmatprep.subr.mxu0 0.0
  %12456 = vmatpush1.msra.mxu0 0.0
  %12457 = vmatprep.mubr.f32.mxu0 0.0
  %12458 = vmatmul.mubr.f32.gmra.mrb[0].mxu0 %v11179
  %v12459 = vpop.f32.mrb[0].mxu0
  %v12460 = vadd.f32 0.0, %v12459
  %v12461 = vpop.f32.mrb[0].mxu0
  %v12462 = vadd.f32 0.0, %v12461
  %12463 = vdwg.mxu0
  %12464 = vmatprep.subr.mxu0 %v11251
  %12465 = vmatpush1.msra.mxu0 %v11249
  %12466 = vmatprep.subr.mxu0 0.0
  %12467 = vmatpush1.msra.mxu0 0.0
  %12468 = vmatprep.subr.mxu0 0.0
  %12469 = vmatpush1.msra.mxu0 0.0
  %12470 = vmatprep.subr.mxu0 0.0
  %12471 = vmatpush1.msra.mxu0 0.0
  %12472 = vmatprep.subr.mxu0 0.0
  %12473 = vmatpush1.msra.mxu0 0.0
  %12474 = vmatprep.subr.mxu0 0.0
  %12475 = vmatpush1.msra.mxu0 0.0
  %12476 = vmatprep.subr.mxu0 0.0
  %12477 = vmatpush1.msra.mxu0 0.0
  %12478 = vmatprep.subr.mxu0 0.0
  %12479 = vmatpush1.msra.mxu0 0.0
  %12480 = vmatprep.subr.mxu0 0.0
  %12481 = vmatpush1.msra.mxu0 0.0
  %12482 = vmatprep.subr.mxu0 0.0
  %12483 = vmatpush1.msra.mxu0 0.0
  %12484 = vmatprep.subr.mxu0 0.0
  %12485 = vmatpush1.msra.mxu0 0.0
  %12486 = vmatprep.subr.mxu0 0.0
  %12487 = vmatpush1.msra.mxu0 0.0
  %12488 = vmatprep.subr.mxu0 0.0
  %12489 = vmatpush1.msra.mxu0 0.0
  %12490 = vmatprep.subr.mxu0 0.0
  %12491 = vmatpush1.msra.mxu0 0.0
  %12492 = vmatprep.subr.mxu0 0.0
  %12493 = vmatpush1.msra.mxu0 0.0
  %12494 = vmatprep.subr.mxu0 0.0
  %12495 = vmatpush1.msra.mxu0 0.0
  %12496 = vmatprep.subr.mxu0 0.0
  %12497 = vmatpush1.msra.mxu0 0.0
  %12498 = vmatprep.subr.mxu0 0.0
  %12499 = vmatpush1.msra.mxu0 0.0
  %12500 = vmatprep.subr.mxu0 0.0
  %12501 = vmatpush1.msra.mxu0 0.0
  %12502 = vmatprep.subr.mxu0 0.0
  %12503 = vmatpush1.msra.mxu0 0.0
  %12504 = vmatprep.subr.mxu0 0.0
  %12505 = vmatpush1.msra.mxu0 0.0
  %12506 = vmatprep.subr.mxu0 0.0
  %12507 = vmatpush1.msra.mxu0 0.0
  %12508 = vmatprep.subr.mxu0 0.0
  %12509 = vmatpush1.msra.mxu0 0.0
  %12510 = vmatprep.subr.mxu0 0.0
  %12511 = vmatpush1.msra.mxu0 0.0
  %12512 = vmatprep.subr.mxu0 0.0
  %12513 = vmatpush1.msra.mxu0 0.0
  %12514 = vmatprep.subr.mxu0 0.0
  %12515 = vmatpush1.msra.mxu0 0.0
  %12516 = vmatprep.subr.mxu0 0.0
  %12517 = vmatpush1.msra.mxu0 0.0
  %12518 = vmatprep.subr.mxu0 0.0
  %12519 = vmatpush1.msra.mxu0 0.0
  %12520 = vmatprep.subr.mxu0 0.0
  %12521 = vmatpush1.msra.mxu0 0.0
  %12522 = vmatprep.subr.mxu0 0.0
  %12523 = vmatpush1.msra.mxu0 0.0
  %12524 = vmatprep.subr.mxu0 0.0
  %12525 = vmatpush1.msra.mxu0 0.0
  %12526 = vmatprep.subr.mxu0 0.0
  %12527 = vmatpush1.msra.mxu0 0.0
  %12528 = vmatprep.mubr.f32.mxu0 0.0
  %12529 = vmatmul.mubr.f32.gmra.mrb[0].mxu0 %v11179
  %v12530 = vpop.f32.mrb[0].mxu0
  %v12531 = vadd.f32 0.0, %v12530
  %v12532 = vpop.f32.mrb[0].mxu0
  %v12533 = vadd.f32 0.0, %v12532
  %12534 = vdwg.mxu0
  %12535 = vmatprep.subr.mxu0 %v11255
  %12536 = vmatpush1.msra.mxu0 %v11253
  %12537 = vmatprep.subr.mxu0 0.0
  %12538 = vmatpush1.msra.mxu0 0.0
  %12539 = vmatprep.subr.mxu0 0.0
  %12540 = vmatpush1.msra.mxu0 0.0
  %12541 = vmatprep.subr.mxu0 0.0
  %12542 = vmatpush1.msra.mxu0 0.0
  %12543 = vmatprep.subr.mxu0 0.0
  %12544 = vmatpush1.msra.mxu0 0.0
  %12545 = vmatprep.subr.mxu0 0.0
  %12546 = vmatpush1.msra.mxu0 0.0
  %12547 = vmatprep.subr.mxu0 0.0
  %12548 = vmatpush1.msra.mxu0 0.0
  %12549 = vmatprep.subr.mxu0 0.0
  %12550 = vmatpush1.msra.mxu0 0.0
  %12551 = vmatprep.subr.mxu0 0.0
  %12552 = vmatpush1.msra.mxu0 0.0
  %12553 = vmatprep.subr.mxu0 0.0
  %12554 = vmatpush1.msra.mxu0 0.0
  %12555 = vmatprep.subr.mxu0 0.0
  %12556 = vmatpush1.msra.mxu0 0.0
  %12557 = vmatprep.subr.mxu0 0.0
  %12558 = vmatpush1.msra.mxu0 0.0
  %12559 = vmatprep.subr.mxu0 0.0
  %12560 = vmatpush1.msra.mxu0 0.0
  %12561 = vmatprep.subr.mxu0 0.0
  %12562 = vmatpush1.msra.mxu0 0.0
  %12563 = vmatprep.subr.mxu0 0.0
  %12564 = vmatpush1.msra.mxu0 0.0
  %12565 = vmatprep.subr.mxu0 0.0
  %12566 = vmatpush1.msra.mxu0 0.0
  %12567 = vmatprep.subr.mxu0 0.0
  %12568 = vmatpush1.msra.mxu0 0.0
  %12569 = vmatprep.subr.mxu0 0.0
  %12570 = vmatpush1.msra.mxu0 0.0
  %12571 = vmatprep.subr.mxu0 0.0
  %12572 = vmatpush1.msra.mxu0 0.0
  %12573 = vmatprep.subr.mxu0 0.0
  %12574 = vmatpush1.msra.mxu0 0.0
  %12575 = vmatprep.subr.mxu0 0.0
  %12576 = vmatpush1.msra.mxu0 0.0
  %12577 = vmatprep.subr.mxu0 0.0
  %12578 = vmatpush1.msra.mxu0 0.0
  %12579 = vmatprep.subr.mxu0 0.0
  %12580 = vmatpush1.msra.mxu0 0.0
  %12581 = vmatprep.subr.mxu0 0.0
  %12582 = vmatpush1.msra.mxu0 0.0
  %12583 = vmatprep.subr.mxu0 0.0
  %12584 = vmatpush1.msra.mxu0 0.0
  %12585 = vmatprep.subr.mxu0 0.0
  %12586 = vmatpush1.msra.mxu0 0.0
  %12587 = vmatprep.subr.mxu0 0.0
  %12588 = vmatpush1.msra.mxu0 0.0
  %12589 = vmatprep.subr.mxu0 0.0
  %12590 = vmatpush1.msra.mxu0 0.0
  %12591 = vmatprep.subr.mxu0 0.0
  %12592 = vmatpush1.msra.mxu0 0.0
  %12593 = vmatprep.subr.mxu0 0.0
  %12594 = vmatpush1.msra.mxu0 0.0
  %12595 = vmatprep.subr.mxu0 0.0
  %12596 = vmatpush1.msra.mxu0 0.0
  %12597 = vmatprep.subr.mxu0 0.0
  %12598 = vmatpush1.msra.mxu0 0.0
  %12599 = vmatprep.mubr.f32.mxu0 0.0
  %12600 = vmatmul.mubr.f32.gmra.mrb[0].mxu0 %v11179
  %v12601 = vpop.f32.mrb[0].mxu0
  %v12602 = vadd.f32 0.0, %v12601
  %v12603 = vpop.f32.mrb[0].mxu0
  %v12604 = vadd.f32 0.0, %v12603
  %12605 = vdwg.mxu0
  %v12606 = vadd.f32 %v11021, %v11324
  %v12607 = vadd.f32 %v11022, %v11326
  %v12608 = vadd.f32 %v11023, %v11395
  %v12609 = vadd.f32 %v11024, %v11397
  %v12610 = vadd.f32 %v11025, %v11466
  %v12611 = vadd.f32 %v11026, %v11468
  %v12612 = vadd.f32 %v11027, %v11537
  %v12613 = vadd.f32 %v11028, %v11539
  %v12614 = vadd.f32 %v11029, %v11608
  %v12615 = vadd.f32 %v11030, %v11610
  %v12616 = vadd.f32 %v11031, %v11679
  %v12617 = vadd.f32 %v11032, %v11681
  %v12618 = vadd.f32 %v11033, %v11750
  %v12619 = vadd.f32 %v11034, %v11752
  %v12620 = vadd.f32 %v11035, %v11821
  %v12621 = vadd.f32 %v11036, %v11823
  %v12622 = vadd.f32 %v11037, %v11892
  %v12623 = vadd.f32 %v11038, %v11894
  %v12624 = vadd.f32 %v11039, %v11963
  %v12625 = vadd.f32 %v11040, %v11965
  %v12626 = vadd.f32 %v11041, %v12034
  %v12627 = vadd.f32 %v11042, %v12036
  %v12628 = vadd.f32 %v11043, %v12105
  %v12629 = vadd.f32 %v11044, %v12107
  %v12630 = vadd.f32 %v11045, %v12176
  %v12631 = vadd.f32 %v11046, %v12178
  %v12632 = vadd.f32 %v11047, %v12247
  %v12633 = vadd.f32 %v11048, %v12249
  %v12634 = vadd.f32 %v11049, %v12318
  %v12635 = vadd.f32 %v11050, %v12320
  %v12636 = vadd.f32 %v11051, %v12389
  %v12637 = vadd.f32 %v11052, %v12391
  %v12638 = vadd.f32 %v11053, %v12460
  %v12639 = vadd.f32 %v11054, %v12462
  %v12640 = vadd.f32 %v11055, %v12531
  %v12641 = vadd.f32 %v11056, %v12533
  %v12642 = vadd.f32 %v11057, %v12602
  %v12643 = vadd.f32 %v11058, %v12604
  %s12644 = scalar_lea.vmem %s1, 64
  %v12645 = vld [vmem:[%s12644] sm:$0xff]
  %12646 = vrot.lane.b32.xlu0 %v60, 114
  %v12647 = vpop.permute.xlu0 %12646
  %12648 = vrot.lane.b32.xlu0 %v15, 114
  %v12649 = vpop.permute.xlu0 %12648
  %12650 = vrot.lane.b32.xlu0 %v61, 114
  %v12651 = vpop.permute.xlu0 %12650
  %12652 = vrot.lane.b32.xlu0 %v16, 114
  %v12653 = vpop.permute.xlu0 %12652
  %12654 = vrot.lane.b32.xlu0 %v62, 114
  %v12655 = vpop.permute.xlu0 %12654
  %12656 = vrot.lane.b32.xlu0 %v17, 114
  %v12657 = vpop.permute.xlu0 %12656
  %12658 = vrot.lane.b32.xlu0 %v63, 114
  %v12659 = vpop.permute.xlu0 %12658
  %12660 = vrot.lane.b32.xlu0 %v18, 114
  %v12661 = vpop.permute.xlu0 %12660
  %12662 = vrot.lane.b32.xlu0 %v64, 114
  %v12663 = vpop.permute.xlu0 %12662
  %12664 = vrot.lane.b32.xlu0 %v19, 114
  %v12665 = vpop.permute.xlu0 %12664
  %12666 = vrot.lane.b32.xlu0 %v65, 114
  %v12667 = vpop.permute.xlu0 %12666
  %12668 = vrot.lane.b32.xlu0 %v20, 114
  %v12669 = vpop.permute.xlu0 %12668
  %12670 = vrot.lane.b32.xlu0 %v66, 114
  %v12671 = vpop.permute.xlu0 %12670
  %12672 = vrot.lane.b32.xlu0 %v21, 114
  %v12673 = vpop.permute.xlu0 %12672
  %12674 = vrot.lane.b32.xlu0 %v67, 114
  %v12675 = vpop.permute.xlu0 %12674
  %12676 = vrot.lane.b32.xlu0 %v22, 114
  %v12677 = vpop.permute.xlu0 %12676
  %12678 = vrot.lane.b32.xlu0 %v68, 114
  %v12679 = vpop.permute.xlu0 %12678
  %12680 = vrot.lane.b32.xlu0 %v23, 114
  %v12681 = vpop.permute.xlu0 %12680
  %12682 = vrot.lane.b32.xlu0 %v69, 114
  %v12683 = vpop.permute.xlu0 %12682
  %12684 = vrot.lane.b32.xlu0 %v24, 114
  %v12685 = vpop.permute.xlu0 %12684
  %12686 = vrot.lane.b32.xlu0 %v70, 114
  %v12687 = vpop.permute.xlu0 %12686
  %12688 = vrot.lane.b32.xlu0 %v25, 114
  %v12689 = vpop.permute.xlu0 %12688
  %12690 = vrot.lane.b32.xlu0 %v71, 114
  %v12691 = vpop.permute.xlu0 %12690
  %12692 = vrot.lane.b32.xlu0 %v26, 114
  %v12693 = vpop.permute.xlu0 %12692
  %12694 = vrot.lane.b32.xlu0 %v72, 114
  %v12695 = vpop.permute.xlu0 %12694
  %12696 = vrot.lane.b32.xlu0 %v27, 114
  %v12697 = vpop.permute.xlu0 %12696
  %12698 = vrot.lane.b32.xlu0 %v73, 114
  %v12699 = vpop.permute.xlu0 %12698
  %12700 = vrot.lane.b32.xlu0 %v28, 114
  %v12701 = vpop.permute.xlu0 %12700
  %12702 = vrot.lane.b32.xlu0 %v74, 114
  %v12703 = vpop.permute.xlu0 %12702
  %12704 = vrot.lane.b32.xlu0 %v29, 114
  %v12705 = vpop.permute.xlu0 %12704
  %12706 = vrot.lane.b32.xlu0 %v75, 114
  %v12707 = vpop.permute.xlu0 %12706
  %12708 = vrot.lane.b32.xlu0 %v30, 114
  %v12709 = vpop.permute.xlu0 %12708
  %12710 = vrot.lane.b32.xlu0 %v76, 114
  %v12711 = vpop.permute.xlu0 %12710
  %12712 = vrot.lane.b32.xlu0 %v31, 114
  %v12713 = vpop.permute.xlu0 %12712
  %12714 = vrot.lane.b32.xlu0 %v77, 114
  %v12715 = vpop.permute.xlu0 %12714
  %12716 = vrot.lane.b32.xlu0 %v32, 114
  %v12717 = vpop.permute.xlu0 %12716
  %12718 = vrot.lane.b32.xlu0 %v78, 114
  %v12719 = vpop.permute.xlu0 %12718
  %12720 = vrot.lane.b32.xlu0 %v33, 114
  %v12721 = vpop.permute.xlu0 %12720
  %12722 = vrot.lane.b32.xlu0 %v9475, 114
  %v12723 = vpop.permute.xlu0 %12722
  %vm12724 = vcmask 932864
  %v12725 = vsel %vm12724, %v12647, %v12649
  %v12726 = vsel %vm12724, %v12649, %v12651
  %v12727 = vsel %vm12724, %v12651, %v12653
  %v12728 = vsel %vm12724, %v12653, %v12655
  %v12729 = vsel %vm12724, %v12655, %v12657
  %v12730 = vsel %vm12724, %v12657, %v12659
  %v12731 = vsel %vm12724, %v12659, %v12661
  %v12732 = vsel %vm12724, %v12661, %v12663
  %v12733 = vsel %vm12724, %v12663, %v12665
  %v12734 = vsel %vm12724, %v12665, %v12667
  %v12735 = vsel %vm12724, %v12667, %v12669
  %v12736 = vsel %vm12724, %v12669, %v12671
  %v12737 = vsel %vm12724, %v12671, %v12673
  %v12738 = vsel %vm12724, %v12673, %v12675
  %v12739 = vsel %vm12724, %v12675, %v12677
  %v12740 = vsel %vm12724, %v12677, %v12679
  %v12741 = vsel %vm12724, %v12679, %v12681
  %v12742 = vsel %vm12724, %v12681, %v12683
  %v12743 = vsel %vm12724, %v12683, %v12685
  %v12744 = vsel %vm12724, %v12685, %v12687
  %v12745 = vsel %vm12724, %v12687, %v12689
  %v12746 = vsel %vm12724, %v12689, %v12691
  %v12747 = vsel %vm12724, %v12691, %v12693
  %v12748 = vsel %vm12724, %v12693, %v12695
  %v12749 = vsel %vm12724, %v12695, %v12697
  %v12750 = vsel %vm12724, %v12697, %v12699
  %v12751 = vsel %vm12724, %v12699, %v12701
  %v12752 = vsel %vm12724, %v12701, %v12703
  %v12753 = vsel %vm12724, %v12703, %v12705
  %v12754 = vsel %vm12724, %v12705, %v12707
  %v12755 = vsel %vm12724, %v12707, %v12709
  %v12756 = vsel %vm12724, %v12709, %v12711
  %v12757 = vsel %vm12724, %v12711, %v12713
  %v12758 = vsel %vm12724, %v12713, %v12715
  %v12759 = vsel %vm12724, %v12715, %v12717
  %v12760 = vsel %vm12724, %v12717, %v12719
  %v12761 = vsel %vm12724, %v12719, %v12721
  %v12762 = vsel %vm12724, %v12721, %v12723
  %v12764 = vsel %vm79, %v12645, 0
  %v12766 = vsel %vm83, %v12725, 0
  %v12768 = vsel %vm83, %v12726, 0
  %v12770 = vsel %vm83, %v12727, 0
  %v12772 = vsel %vm83, %v12728, 0
  %v12774 = vsel %vm83, %v12729, 0
  %v12776 = vsel %vm83, %v12730, 0
  %v12778 = vsel %vm83, %v12731, 0
  %v12780 = vsel %vm83, %v12732, 0
  %v12782 = vsel %vm83, %v12733, 0
  %v12784 = vsel %vm83, %v12734, 0
  %v12786 = vsel %vm83, %v12735, 0
  %v12788 = vsel %vm83, %v12736, 0
  %v12790 = vsel %vm83, %v12737, 0
  %v12792 = vsel %vm83, %v12738, 0
  %v12794 = vsel %vm83, %v12739, 0
  %v12796 = vsel %vm83, %v12740, 0
  %v12798 = vsel %vm83, %v12741, 0
  %v12800 = vsel %vm83, %v12742, 0
  %v12802 = vsel %vm83, %v12743, 0
  %v12804 = vsel %vm83, %v12744, 0
  %v12806 = vsel %vm83, %v12745, 0
  %v12808 = vsel %vm83, %v12746, 0
  %v12810 = vsel %vm83, %v12747, 0
  %v12812 = vsel %vm83, %v12748, 0
  %v12814 = vsel %vm83, %v12749, 0
  %v12816 = vsel %vm83, %v12750, 0
  %v12818 = vsel %vm83, %v12751, 0
  %v12820 = vsel %vm83, %v12752, 0
  %v12822 = vsel %vm83, %v12753, 0
  %v12824 = vsel %vm83, %v12754, 0
  %v12826 = vsel %vm83, %v12755, 0
  %v12828 = vsel %vm83, %v12756, 0
  %v12830 = vsel %vm83, %v12757, 0
  %v12832 = vsel %vm83, %v12758, 0
  %v12834 = vsel %vm83, %v12759, 0
  %v12836 = vsel %vm83, %v12760, 0
  %v12838 = vsel %vm83, %v12761, 0
  %v12840 = vsel %vm83, %v12762, 0
  %12842 = vmatprep.subr.mxu0 %v12768
  %12843 = vmatpush1.msra.mxu0 %v12766
  %12844 = vmatprep.subr.mxu0 0.0
  %12845 = vmatpush1.msra.mxu0 0.0
  %12846 = vmatprep.subr.mxu0 0.0
  %12847 = vmatpush1.msra.mxu0 0.0
  %12848 = vmatprep.subr.mxu0 0.0
  %12849 = vmatpush1.msra.mxu0 0.0
  %12850 = vmatprep.subr.mxu0 0.0
  %12851 = vmatpush1.msra.mxu0 0.0
  %12852 = vmatprep.subr.mxu0 0.0
  %12853 = vmatpush1.msra.mxu0 0.0
  %12854 = vmatprep.subr.mxu0 0.0
  %12855 = vmatpush1.msra.mxu0 0.0
  %12856 = vmatprep.subr.mxu0 0.0
  %12857 = vmatpush1.msra.mxu0 0.0
  %12858 = vmatprep.subr.mxu0 0.0
  %12859 = vmatpush1.msra.mxu0 0.0
  %12860 = vmatprep.subr.mxu0 0.0
  %12861 = vmatpush1.msra.mxu0 0.0
  %12862 = vmatprep.subr.mxu0 0.0
  %12863 = vmatpush1.msra.mxu0 0.0
  %12864 = vmatprep.subr.mxu0 0.0
  %12865 = vmatpush1.msra.mxu0 0.0
  %12866 = vmatprep.subr.mxu0 0.0
  %12867 = vmatpush1.msra.mxu0 0.0
  %12868 = vmatprep.subr.mxu0 0.0
  %12869 = vmatpush1.msra.mxu0 0.0
  %12870 = vmatprep.subr.mxu0 0.0
  %12871 = vmatpush1.msra.mxu0 0.0
  %12872 = vmatprep.subr.mxu0 0.0
  %12873 = vmatpush1.msra.mxu0 0.0
  %12874 = vmatprep.subr.mxu0 0.0
  %12875 = vmatpush1.msra.mxu0 0.0
  %12876 = vmatprep.subr.mxu0 0.0
  %12877 = vmatpush1.msra.mxu0 0.0
  %12878 = vmatprep.subr.mxu0 0.0
  %12879 = vmatpush1.msra.mxu0 0.0
  %12880 = vmatprep.subr.mxu0 0.0
  %12881 = vmatpush1.msra.mxu0 0.0
  %12882 = vmatprep.subr.mxu0 0.0
  %12883 = vmatpush1.msra.mxu0 0.0
  %12884 = vmatprep.subr.mxu0 0.0
  %12885 = vmatpush1.msra.mxu0 0.0
  %12886 = vmatprep.subr.mxu0 0.0
  %12887 = vmatpush1.msra.mxu0 0.0
  %12888 = vmatprep.subr.mxu0 0.0
  %12889 = vmatpush1.msra.mxu0 0.0
  %12890 = vmatprep.subr.mxu0 0.0
  %12891 = vmatpush1.msra.mxu0 0.0
  %12892 = vmatprep.subr.mxu0 0.0
  %12893 = vmatpush1.msra.mxu0 0.0
  %12894 = vmatprep.subr.mxu0 0.0
  %12895 = vmatpush1.msra.mxu0 0.0
  %12896 = vmatprep.subr.mxu0 0.0
  %12897 = vmatpush1.msra.mxu0 0.0
  %12898 = vmatprep.subr.mxu0 0.0
  %12899 = vmatpush1.msra.mxu0 0.0
  %12900 = vmatprep.subr.mxu0 0.0
  %12901 = vmatpush1.msra.mxu0 0.0
  %12902 = vmatprep.subr.mxu0 0.0
  %12903 = vmatpush1.msra.mxu0 0.0
  %12904 = vmatprep.subr.mxu0 0.0
  %12905 = vmatpush1.msra.mxu0 0.0
  %12906 = vmatprep.mubr.f32.mxu0 0.0
  %12907 = vmatmul.mubr.f32.gmra.mrb[0].mxu0 %v12764
  %v12908 = vpop.f32.mrb[0].mxu0
  %v12909 = vadd.f32 0.0, %v12908
  %v12910 = vpop.f32.mrb[0].mxu0
  %v12911 = vadd.f32 0.0, %v12910
  %12912 = vdwg.mxu0
  %12913 = vmatprep.subr.mxu0 %v12772
  %12914 = vmatpush1.msra.mxu0 %v12770
  %12915 = vmatprep.subr.mxu0 0.0
  %12916 = vmatpush1.msra.mxu0 0.0
  %12917 = vmatprep.subr.mxu0 0.0
  %12918 = vmatpush1.msra.mxu0 0.0
  %12919 = vmatprep.subr.mxu0 0.0
  %12920 = vmatpush1.msra.mxu0 0.0
  %12921 = vmatprep.subr.mxu0 0.0
  %12922 = vmatpush1.msra.mxu0 0.0
  %12923 = vmatprep.subr.mxu0 0.0
  %12924 = vmatpush1.msra.mxu0 0.0
  %12925 = vmatprep.subr.mxu0 0.0
  %12926 = vmatpush1.msra.mxu0 0.0
  %12927 = vmatprep.subr.mxu0 0.0
  %12928 = vmatpush1.msra.mxu0 0.0
  %12929 = vmatprep.subr.mxu0 0.0
  %12930 = vmatpush1.msra.mxu0 0.0
  %12931 = vmatprep.subr.mxu0 0.0
  %12932 = vmatpush1.msra.mxu0 0.0
  %12933 = vmatprep.subr.mxu0 0.0
  %12934 = vmatpush1.msra.mxu0 0.0
  %12935 = vmatprep.subr.mxu0 0.0
  %12936 = vmatpush1.msra.mxu0 0.0
  %12937 = vmatprep.subr.mxu0 0.0
  %12938 = vmatpush1.msra.mxu0 0.0
  %12939 = vmatprep.subr.mxu0 0.0
  %12940 = vmatpush1.msra.mxu0 0.0
  %12941 = vmatprep.subr.mxu0 0.0
  %12942 = vmatpush1.msra.mxu0 0.0
  %12943 = vmatprep.subr.mxu0 0.0
  %12944 = vmatpush1.msra.mxu0 0.0
  %12945 = vmatprep.subr.mxu0 0.0
  %12946 = vmatpush1.msra.mxu0 0.0
  %12947 = vmatprep.subr.mxu0 0.0
  %12948 = vmatpush1.msra.mxu0 0.0
  %12949 = vmatprep.subr.mxu0 0.0
  %12950 = vmatpush1.msra.mxu0 0.0
  %12951 = vmatprep.subr.mxu0 0.0
  %12952 = vmatpush1.msra.mxu0 0.0
  %12953 = vmatprep.subr.mxu0 0.0
  %12954 = vmatpush1.msra.mxu0 0.0
  %12955 = vmatprep.subr.mxu0 0.0
  %12956 = vmatpush1.msra.mxu0 0.0
  %12957 = vmatprep.subr.mxu0 0.0
  %12958 = vmatpush1.msra.mxu0 0.0
  %12959 = vmatprep.subr.mxu0 0.0
  %12960 = vmatpush1.msra.mxu0 0.0
  %12961 = vmatprep.subr.mxu0 0.0
  %12962 = vmatpush1.msra.mxu0 0.0
  %12963 = vmatprep.subr.mxu0 0.0
  %12964 = vmatpush1.msra.mxu0 0.0
  %12965 = vmatprep.subr.mxu0 0.0
  %12966 = vmatpush1.msra.mxu0 0.0
  %12967 = vmatprep.subr.mxu0 0.0
  %12968 = vmatpush1.msra.mxu0 0.0
  %12969 = vmatprep.subr.mxu0 0.0
  %12970 = vmatpush1.msra.mxu0 0.0
  %12971 = vmatprep.subr.mxu0 0.0
  %12972 = vmatpush1.msra.mxu0 0.0
  %12973 = vmatprep.subr.mxu0 0.0
  %12974 = vmatpush1.msra.mxu0 0.0
  %12975 = vmatprep.subr.mxu0 0.0
  %12976 = vmatpush1.msra.mxu0 0.0
  %12977 = vmatprep.mubr.f32.mxu0 0.0
  %12978 = vmatmul.mubr.f32.gmra.mrb[0].mxu0 %v12764
  %v12979 = vpop.f32.mrb[0].mxu0
  %v12980 = vadd.f32 0.0, %v12979
  %v12981 = vpop.f32.mrb[0].mxu0
  %v12982 = vadd.f32 0.0, %v12981
  %12983 = vdwg.mxu0
  %12984 = vmatprep.subr.mxu0 %v12776
  %12985 = vmatpush1.msra.mxu0 %v12774
  %12986 = vmatprep.subr.mxu0 0.0
  %12987 = vmatpush1.msra.mxu0 0.0
  %12988 = vmatprep.subr.mxu0 0.0
  %12989 = vmatpush1.msra.mxu0 0.0
  %12990 = vmatprep.subr.mxu0 0.0
  %12991 = vmatpush1.msra.mxu0 0.0
  %12992 = vmatprep.subr.mxu0 0.0
  %12993 = vmatpush1.msra.mxu0 0.0
  %12994 = vmatprep.subr.mxu0 0.0
  %12995 = vmatpush1.msra.mxu0 0.0
  %12996 = vmatprep.subr.mxu0 0.0
  %12997 = vmatpush1.msra.mxu0 0.0
  %12998 = vmatprep.subr.mxu0 0.0
  %12999 = vmatpush1.msra.mxu0 0.0
  %13000 = vmatprep.subr.mxu0 0.0
  %13001 = vmatpush1.msra.mxu0 0.0
  %13002 = vmatprep.subr.mxu0 0.0
  %13003 = vmatpush1.msra.mxu0 0.0
  %13004 = vmatprep.subr.mxu0 0.0
  %13005 = vmatpush1.msra.mxu0 0.0
  %13006 = vmatprep.subr.mxu0 0.0
  %13007 = vmatpush1.msra.mxu0 0.0
  %13008 = vmatprep.subr.mxu0 0.0
  %13009 = vmatpush1.msra.mxu0 0.0
  %13010 = vmatprep.subr.mxu0 0.0
  %13011 = vmatpush1.msra.mxu0 0.0
  %13012 = vmatprep.subr.mxu0 0.0
  %13013 = vmatpush1.msra.mxu0 0.0
  %13014 = vmatprep.subr.mxu0 0.0
  %13015 = vmatpush1.msra.mxu0 0.0
  %13016 = vmatprep.subr.mxu0 0.0
  %13017 = vmatpush1.msra.mxu0 0.0
  %13018 = vmatprep.subr.mxu0 0.0
  %13019 = vmatpush1.msra.mxu0 0.0
  %13020 = vmatprep.subr.mxu0 0.0
  %13021 = vmatpush1.msra.mxu0 0.0
  %13022 = vmatprep.subr.mxu0 0.0
  %13023 = vmatpush1.msra.mxu0 0.0
  %13024 = vmatprep.subr.mxu0 0.0
  %13025 = vmatpush1.msra.mxu0 0.0
  %13026 = vmatprep.subr.mxu0 0.0
  %13027 = vmatpush1.msra.mxu0 0.0
  %13028 = vmatprep.subr.mxu0 0.0
  %13029 = vmatpush1.msra.mxu0 0.0
  %13030 = vmatprep.subr.mxu0 0.0
  %13031 = vmatpush1.msra.mxu0 0.0
  %13032 = vmatprep.subr.mxu0 0.0
  %13033 = vmatpush1.msra.mxu0 0.0
  %13034 = vmatprep.subr.mxu0 0.0
  %13035 = vmatpush1.msra.mxu0 0.0
  %13036 = vmatprep.subr.mxu0 0.0
  %13037 = vmatpush1.msra.mxu0 0.0
  %13038 = vmatprep.subr.mxu0 0.0
  %13039 = vmatpush1.msra.mxu0 0.0
  %13040 = vmatprep.subr.mxu0 0.0
  %13041 = vmatpush1.msra.mxu0 0.0
  %13042 = vmatprep.subr.mxu0 0.0
  %13043 = vmatpush1.msra.mxu0 0.0
  %13044 = vmatprep.subr.mxu0 0.0
  %13045 = vmatpush1.msra.mxu0 0.0
  %13046 = vmatprep.subr.mxu0 0.0
  %13047 = vmatpush1.msra.mxu0 0.0
  %13048 = vmatprep.mubr.f32.mxu0 0.0
  %13049 = vmatmul.mubr.f32.gmra.mrb[0].mxu0 %v12764
  %v13050 = vpop.f32.mrb[0].mxu0
  %v13051 = vadd.f32 0.0, %v13050
  %v13052 = vpop.f32.mrb[0].mxu0
  %v13053 = vadd.f32 0.0, %v13052
  %13054 = vdwg.mxu0
  %13055 = vmatprep.subr.mxu0 %v12780
  %13056 = vmatpush1.msra.mxu0 %v12778
  %13057 = vmatprep.subr.mxu0 0.0
  %13058 = vmatpush1.msra.mxu0 0.0
  %13059 = vmatprep.subr.mxu0 0.0
  %13060 = vmatpush1.msra.mxu0 0.0
  %13061 = vmatprep.subr.mxu0 0.0
  %13062 = vmatpush1.msra.mxu0 0.0
  %13063 = vmatprep.subr.mxu0 0.0
  %13064 = vmatpush1.msra.mxu0 0.0
  %13065 = vmatprep.subr.mxu0 0.0
  %13066 = vmatpush1.msra.mxu0 0.0
  %13067 = vmatprep.subr.mxu0 0.0
  %13068 = vmatpush1.msra.mxu0 0.0
  %13069 = vmatprep.subr.mxu0 0.0
  %13070 = vmatpush1.msra.mxu0 0.0
  %13071 = vmatprep.subr.mxu0 0.0
  %13072 = vmatpush1.msra.mxu0 0.0
  %13073 = vmatprep.subr.mxu0 0.0
  %13074 = vmatpush1.msra.mxu0 0.0
  %13075 = vmatprep.subr.mxu0 0.0
  %13076 = vmatpush1.msra.mxu0 0.0
  %13077 = vmatprep.subr.mxu0 0.0
  %13078 = vmatpush1.msra.mxu0 0.0
  %13079 = vmatprep.subr.mxu0 0.0
  %13080 = vmatpush1.msra.mxu0 0.0
  %13081 = vmatprep.subr.mxu0 0.0
  %13082 = vmatpush1.msra.mxu0 0.0
  %13083 = vmatprep.subr.mxu0 0.0
  %13084 = vmatpush1.msra.mxu0 0.0
  %13085 = vmatprep.subr.mxu0 0.0
  %13086 = vmatpush1.msra.mxu0 0.0
  %13087 = vmatprep.subr.mxu0 0.0
  %13088 = vmatpush1.msra.mxu0 0.0
  %13089 = vmatprep.subr.mxu0 0.0
  %13090 = vmatpush1.msra.mxu0 0.0
  %13091 = vmatprep.subr.mxu0 0.0
  %13092 = vmatpush1.msra.mxu0 0.0
  %13093 = vmatprep.subr.mxu0 0.0
  %13094 = vmatpush1.msra.mxu0 0.0
  %13095 = vmatprep.subr.mxu0 0.0
  %13096 = vmatpush1.msra.mxu0 0.0
  %13097 = vmatprep.subr.mxu0 0.0
  %13098 = vmatpush1.msra.mxu0 0.0
  %13099 = vmatprep.subr.mxu0 0.0
  %13100 = vmatpush1.msra.mxu0 0.0
  %13101 = vmatprep.subr.mxu0 0.0
  %13102 = vmatpush1.msra.mxu0 0.0
  %13103 = vmatprep.subr.mxu0 0.0
  %13104 = vmatpush1.msra.mxu0 0.0
  %13105 = vmatprep.subr.mxu0 0.0
  %13106 = vmatpush1.msra.mxu0 0.0
  %13107 = vmatprep.subr.mxu0 0.0
  %13108 = vmatpush1.msra.mxu0 0.0
  %13109 = vmatprep.subr.mxu0 0.0
  %13110 = vmatpush1.msra.mxu0 0.0
  %13111 = vmatprep.subr.mxu0 0.0
  %13112 = vmatpush1.msra.mxu0 0.0
  %13113 = vmatprep.subr.mxu0 0.0
  %13114 = vmatpush1.msra.mxu0 0.0
  %13115 = vmatprep.subr.mxu0 0.0
  %13116 = vmatpush1.msra.mxu0 0.0
  %13117 = vmatprep.subr.mxu0 0.0
  %13118 = vmatpush1.msra.mxu0 0.0
  %13119 = vmatprep.mubr.f32.mxu0 0.0
  %13120 = vmatmul.mubr.f32.gmra.mrb[0].mxu0 %v12764
  %v13121 = vpop.f32.mrb[0].mxu0
  %v13122 = vadd.f32 0.0, %v13121
  %v13123 = vpop.f32.mrb[0].mxu0
  %v13124 = vadd.f32 0.0, %v13123
  %13125 = vdwg.mxu0
  %13126 = vmatprep.subr.mxu0 %v12784
  %13127 = vmatpush1.msra.mxu0 %v12782
  %13128 = vmatprep.subr.mxu0 0.0
  %13129 = vmatpush1.msra.mxu0 0.0
  %13130 = vmatprep.subr.mxu0 0.0
  %13131 = vmatpush1.msra.mxu0 0.0
  %13132 = vmatprep.subr.mxu0 0.0
  %13133 = vmatpush1.msra.mxu0 0.0
  %13134 = vmatprep.subr.mxu0 0.0
  %13135 = vmatpush1.msra.mxu0 0.0
  %13136 = vmatprep.subr.mxu0 0.0
  %13137 = vmatpush1.msra.mxu0 0.0
  %13138 = vmatprep.subr.mxu0 0.0
  %13139 = vmatpush1.msra.mxu0 0.0
  %13140 = vmatprep.subr.mxu0 0.0
  %13141 = vmatpush1.msra.mxu0 0.0
  %13142 = vmatprep.subr.mxu0 0.0
  %13143 = vmatpush1.msra.mxu0 0.0
  %13144 = vmatprep.subr.mxu0 0.0
  %13145 = vmatpush1.msra.mxu0 0.0
  %13146 = vmatprep.subr.mxu0 0.0
  %13147 = vmatpush1.msra.mxu0 0.0
  %13148 = vmatprep.subr.mxu0 0.0
  %13149 = vmatpush1.msra.mxu0 0.0
  %13150 = vmatprep.subr.mxu0 0.0
  %13151 = vmatpush1.msra.mxu0 0.0
  %13152 = vmatprep.subr.mxu0 0.0
  %13153 = vmatpush1.msra.mxu0 0.0
  %13154 = vmatprep.subr.mxu0 0.0
  %13155 = vmatpush1.msra.mxu0 0.0
  %13156 = vmatprep.subr.mxu0 0.0
  %13157 = vmatpush1.msra.mxu0 0.0
  %13158 = vmatprep.subr.mxu0 0.0
  %13159 = vmatpush1.msra.mxu0 0.0
  %13160 = vmatprep.subr.mxu0 0.0
  %13161 = vmatpush1.msra.mxu0 0.0
  %13162 = vmatprep.subr.mxu0 0.0
  %13163 = vmatpush1.msra.mxu0 0.0
  %13164 = vmatprep.subr.mxu0 0.0
  %13165 = vmatpush1.msra.mxu0 0.0
  %13166 = vmatprep.subr.mxu0 0.0
  %13167 = vmatpush1.msra.mxu0 0.0
  %13168 = vmatprep.subr.mxu0 0.0
  %13169 = vmatpush1.msra.mxu0 0.0
  %13170 = vmatprep.subr.mxu0 0.0
  %13171 = vmatpush1.msra.mxu0 0.0
  %13172 = vmatprep.subr.mxu0 0.0
  %13173 = vmatpush1.msra.mxu0 0.0
  %13174 = vmatprep.subr.mxu0 0.0
  %13175 = vmatpush1.msra.mxu0 0.0
  %13176 = vmatprep.subr.mxu0 0.0
  %13177 = vmatpush1.msra.mxu0 0.0
  %13178 = vmatprep.subr.mxu0 0.0
  %13179 = vmatpush1.msra.mxu0 0.0
  %13180 = vmatprep.subr.mxu0 0.0
  %13181 = vmatpush1.msra.mxu0 0.0
  %13182 = vmatprep.subr.mxu0 0.0
  %13183 = vmatpush1.msra.mxu0 0.0
  %13184 = vmatprep.subr.mxu0 0.0
  %13185 = vmatpush1.msra.mxu0 0.0
  %13186 = vmatprep.subr.mxu0 0.0
  %13187 = vmatpush1.msra.mxu0 0.0
  %13188 = vmatprep.subr.mxu0 0.0
  %13189 = vmatpush1.msra.mxu0 0.0
  %13190 = vmatprep.mubr.f32.mxu0 0.0
  %13191 = vmatmul.mubr.f32.gmra.mrb[0].mxu0 %v12764
  %v13192 = vpop.f32.mrb[0].mxu0
  %v13193 = vadd.f32 0.0, %v13192
  %v13194 = vpop.f32.mrb[0].mxu0
  %v13195 = vadd.f32 0.0, %v13194
  %13196 = vdwg.mxu0
  %13197 = vmatprep.subr.mxu0 %v12788
  %13198 = vmatpush1.msra.mxu0 %v12786
  %13199 = vmatprep.subr.mxu0 0.0
  %13200 = vmatpush1.msra.mxu0 0.0
  %13201 = vmatprep.subr.mxu0 0.0
  %13202 = vmatpush1.msra.mxu0 0.0
  %13203 = vmatprep.subr.mxu0 0.0
  %13204 = vmatpush1.msra.mxu0 0.0
  %13205 = vmatprep.subr.mxu0 0.0
  %13206 = vmatpush1.msra.mxu0 0.0
  %13207 = vmatprep.subr.mxu0 0.0
  %13208 = vmatpush1.msra.mxu0 0.0
  %13209 = vmatprep.subr.mxu0 0.0
  %13210 = vmatpush1.msra.mxu0 0.0
  %13211 = vmatprep.subr.mxu0 0.0
  %13212 = vmatpush1.msra.mxu0 0.0
  %13213 = vmatprep.subr.mxu0 0.0
  %13214 = vmatpush1.msra.mxu0 0.0
  %13215 = vmatprep.subr.mxu0 0.0
  %13216 = vmatpush1.msra.mxu0 0.0
  %13217 = vmatprep.subr.mxu0 0.0
  %13218 = vmatpush1.msra.mxu0 0.0
  %13219 = vmatprep.subr.mxu0 0.0
  %13220 = vmatpush1.msra.mxu0 0.0
  %13221 = vmatprep.subr.mxu0 0.0
  %13222 = vmatpush1.msra.mxu0 0.0
  %13223 = vmatprep.subr.mxu0 0.0
  %13224 = vmatpush1.msra.mxu0 0.0
  %13225 = vmatprep.subr.mxu0 0.0
  %13226 = vmatpush1.msra.mxu0 0.0
  %13227 = vmatprep.subr.mxu0 0.0
  %13228 = vmatpush1.msra.mxu0 0.0
  %13229 = vmatprep.subr.mxu0 0.0
  %13230 = vmatpush1.msra.mxu0 0.0
  %13231 = vmatprep.subr.mxu0 0.0
  %13232 = vmatpush1.msra.mxu0 0.0
  %13233 = vmatprep.subr.mxu0 0.0
  %13234 = vmatpush1.msra.mxu0 0.0
  %13235 = vmatprep.subr.mxu0 0.0
  %13236 = vmatpush1.msra.mxu0 0.0
  %13237 = vmatprep.subr.mxu0 0.0
  %13238 = vmatpush1.msra.mxu0 0.0
  %13239 = vmatprep.subr.mxu0 0.0
  %13240 = vmatpush1.msra.mxu0 0.0
  %13241 = vmatprep.subr.mxu0 0.0
  %13242 = vmatpush1.msra.mxu0 0.0
  %13243 = vmatprep.subr.mxu0 0.0
  %13244 = vmatpush1.msra.mxu0 0.0
  %13245 = vmatprep.subr.mxu0 0.0
  %13246 = vmatpush1.msra.mxu0 0.0
  %13247 = vmatprep.subr.mxu0 0.0
  %13248 = vmatpush1.msra.mxu0 0.0
  %13249 = vmatprep.subr.mxu0 0.0
  %13250 = vmatpush1.msra.mxu0 0.0
  %13251 = vmatprep.subr.mxu0 0.0
  %13252 = vmatpush1.msra.mxu0 0.0
  %13253 = vmatprep.subr.mxu0 0.0
  %13254 = vmatpush1.msra.mxu0 0.0
  %13255 = vmatprep.subr.mxu0 0.0
  %13256 = vmatpush1.msra.mxu0 0.0
  %13257 = vmatprep.subr.mxu0 0.0
  %13258 = vmatpush1.msra.mxu0 0.0
  %13259 = vmatprep.subr.mxu0 0.0
  %13260 = vmatpush1.msra.mxu0 0.0
  %13261 = vmatprep.mubr.f32.mxu0 0.0
  %13262 = vmatmul.mubr.f32.gmra.mrb[0].mxu0 %v12764
  %v13263 = vpop.f32.mrb[0].mxu0
  %v13264 = vadd.f32 0.0, %v13263
  %v13265 = vpop.f32.mrb[0].mxu0
  %v13266 = vadd.f32 0.0, %v13265
  %13267 = vdwg.mxu0
  %13268 = vmatprep.subr.mxu0 %v12792
  %13269 = vmatpush1.msra.mxu0 %v12790
  %13270 = vmatprep.subr.mxu0 0.0
  %13271 = vmatpush1.msra.mxu0 0.0
  %13272 = vmatprep.subr.mxu0 0.0
  %13273 = vmatpush1.msra.mxu0 0.0
  %13274 = vmatprep.subr.mxu0 0.0
  %13275 = vmatpush1.msra.mxu0 0.0
  %13276 = vmatprep.subr.mxu0 0.0
  %13277 = vmatpush1.msra.mxu0 0.0
  %13278 = vmatprep.subr.mxu0 0.0
  %13279 = vmatpush1.msra.mxu0 0.0
  %13280 = vmatprep.subr.mxu0 0.0
  %13281 = vmatpush1.msra.mxu0 0.0
  %13282 = vmatprep.subr.mxu0 0.0
  %13283 = vmatpush1.msra.mxu0 0.0
  %13284 = vmatprep.subr.mxu0 0.0
  %13285 = vmatpush1.msra.mxu0 0.0
  %13286 = vmatprep.subr.mxu0 0.0
  %13287 = vmatpush1.msra.mxu0 0.0
  %13288 = vmatprep.subr.mxu0 0.0
  %13289 = vmatpush1.msra.mxu0 0.0
  %13290 = vmatprep.subr.mxu0 0.0
  %13291 = vmatpush1.msra.mxu0 0.0
  %13292 = vmatprep.subr.mxu0 0.0
  %13293 = vmatpush1.msra.mxu0 0.0
  %13294 = vmatprep.subr.mxu0 0.0
  %13295 = vmatpush1.msra.mxu0 0.0
  %13296 = vmatprep.subr.mxu0 0.0
  %13297 = vmatpush1.msra.mxu0 0.0
  %13298 = vmatprep.subr.mxu0 0.0
  %13299 = vmatpush1.msra.mxu0 0.0
  %13300 = vmatprep.subr.mxu0 0.0
  %13301 = vmatpush1.msra.mxu0 0.0
  %13302 = vmatprep.subr.mxu0 0.0
  %13303 = vmatpush1.msra.mxu0 0.0
  %13304 = vmatprep.subr.mxu0 0.0
  %13305 = vmatpush1.msra.mxu0 0.0
  %13306 = vmatprep.subr.mxu0 0.0
  %13307 = vmatpush1.msra.mxu0 0.0
  %13308 = vmatprep.subr.mxu0 0.0
  %13309 = vmatpush1.msra.mxu0 0.0
  %13310 = vmatprep.subr.mxu0 0.0
  %13311 = vmatpush1.msra.mxu0 0.0
  %13312 = vmatprep.subr.mxu0 0.0
  %13313 = vmatpush1.msra.mxu0 0.0
  %13314 = vmatprep.subr.mxu0 0.0
  %13315 = vmatpush1.msra.mxu0 0.0
  %13316 = vmatprep.subr.mxu0 0.0
  %13317 = vmatpush1.msra.mxu0 0.0
  %13318 = vmatprep.subr.mxu0 0.0
  %13319 = vmatpush1.msra.mxu0 0.0
  %13320 = vmatprep.subr.mxu0 0.0
  %13321 = vmatpush1.msra.mxu0 0.0
  %13322 = vmatprep.subr.mxu0 0.0
  %13323 = vmatpush1.msra.mxu0 0.0
  %13324 = vmatprep.subr.mxu0 0.0
  %13325 = vmatpush1.msra.mxu0 0.0
  %13326 = vmatprep.subr.mxu0 0.0
  %13327 = vmatpush1.msra.mxu0 0.0
  %13328 = vmatprep.subr.mxu0 0.0
  %13329 = vmatpush1.msra.mxu0 0.0
  %13330 = vmatprep.subr.mxu0 0.0
  %13331 = vmatpush1.msra.mxu0 0.0
  %13332 = vmatprep.mubr.f32.mxu0 0.0
  %13333 = vmatmul.mubr.f32.gmra.mrb[0].mxu0 %v12764
  %v13334 = vpop.f32.mrb[0].mxu0
  %v13335 = vadd.f32 0.0, %v13334
  %v13336 = vpop.f32.mrb[0].mxu0
  %v13337 = vadd.f32 0.0, %v13336
  %13338 = vdwg.mxu0
  %13339 = vmatprep.subr.mxu0 %v12796
  %13340 = vmatpush1.msra.mxu0 %v12794
  %13341 = vmatprep.subr.mxu0 0.0
  %13342 = vmatpush1.msra.mxu0 0.0
  %13343 = vmatprep.subr.mxu0 0.0
  %13344 = vmatpush1.msra.mxu0 0.0
  %13345 = vmatprep.subr.mxu0 0.0
  %13346 = vmatpush1.msra.mxu0 0.0
  %13347 = vmatprep.subr.mxu0 0.0
  %13348 = vmatpush1.msra.mxu0 0.0
  %13349 = vmatprep.subr.mxu0 0.0
  %13350 = vmatpush1.msra.mxu0 0.0
  %13351 = vmatprep.subr.mxu0 0.0
  %13352 = vmatpush1.msra.mxu0 0.0
  %13353 = vmatprep.subr.mxu0 0.0
  %13354 = vmatpush1.msra.mxu0 0.0
  %13355 = vmatprep.subr.mxu0 0.0
  %13356 = vmatpush1.msra.mxu0 0.0
  %13357 = vmatprep.subr.mxu0 0.0
  %13358 = vmatpush1.msra.mxu0 0.0
  %13359 = vmatprep.subr.mxu0 0.0
  %13360 = vmatpush1.msra.mxu0 0.0
  %13361 = vmatprep.subr.mxu0 0.0
  %13362 = vmatpush1.msra.mxu0 0.0
  %13363 = vmatprep.subr.mxu0 0.0
  %13364 = vmatpush1.msra.mxu0 0.0
  %13365 = vmatprep.subr.mxu0 0.0
  %13366 = vmatpush1.msra.mxu0 0.0
  %13367 = vmatprep.subr.mxu0 0.0
  %13368 = vmatpush1.msra.mxu0 0.0
  %13369 = vmatprep.subr.mxu0 0.0
  %13370 = vmatpush1.msra.mxu0 0.0
  %13371 = vmatprep.subr.mxu0 0.0
  %13372 = vmatpush1.msra.mxu0 0.0
  %13373 = vmatprep.subr.mxu0 0.0
  %13374 = vmatpush1.msra.mxu0 0.0
  %13375 = vmatprep.subr.mxu0 0.0
  %13376 = vmatpush1.msra.mxu0 0.0
  %13377 = vmatprep.subr.mxu0 0.0
  %13378 = vmatpush1.msra.mxu0 0.0
  %13379 = vmatprep.subr.mxu0 0.0
  %13380 = vmatpush1.msra.mxu0 0.0
  %13381 = vmatprep.subr.mxu0 0.0
  %13382 = vmatpush1.msra.mxu0 0.0
  %13383 = vmatprep.subr.mxu0 0.0
  %13384 = vmatpush1.msra.mxu0 0.0
  %13385 = vmatprep.subr.mxu0 0.0
  %13386 = vmatpush1.msra.mxu0 0.0
  %13387 = vmatprep.subr.mxu0 0.0
  %13388 = vmatpush1.msra.mxu0 0.0
  %13389 = vmatprep.subr.mxu0 0.0
  %13390 = vmatpush1.msra.mxu0 0.0
  %13391 = vmatprep.subr.mxu0 0.0
  %13392 = vmatpush1.msra.mxu0 0.0
  %13393 = vmatprep.subr.mxu0 0.0
  %13394 = vmatpush1.msra.mxu0 0.0
  %13395 = vmatprep.subr.mxu0 0.0
  %13396 = vmatpush1.msra.mxu0 0.0
  %13397 = vmatprep.subr.mxu0 0.0
  %13398 = vmatpush1.msra.mxu0 0.0
  %13399 = vmatprep.subr.mxu0 0.0
  %13400 = vmatpush1.msra.mxu0 0.0
  %13401 = vmatprep.subr.mxu0 0.0
  %13402 = vmatpush1.msra.mxu0 0.0
  %13403 = vmatprep.mubr.f32.mxu0 0.0
  %13404 = vmatmul.mubr.f32.gmra.mrb[0].mxu0 %v12764
  %v13405 = vpop.f32.mrb[0].mxu0
  %v13406 = vadd.f32 0.0, %v13405
  %v13407 = vpop.f32.mrb[0].mxu0
  %v13408 = vadd.f32 0.0, %v13407
  %13409 = vdwg.mxu0
  %13410 = vmatprep.subr.mxu0 %v12800
  %13411 = vmatpush1.msra.mxu0 %v12798
  %13412 = vmatprep.subr.mxu0 0.0
  %13413 = vmatpush1.msra.mxu0 0.0
  %13414 = vmatprep.subr.mxu0 0.0
  %13415 = vmatpush1.msra.mxu0 0.0
  %13416 = vmatprep.subr.mxu0 0.0
  %13417 = vmatpush1.msra.mxu0 0.0
  %13418 = vmatprep.subr.mxu0 0.0
  %13419 = vmatpush1.msra.mxu0 0.0
  %13420 = vmatprep.subr.mxu0 0.0
  %13421 = vmatpush1.msra.mxu0 0.0
  %13422 = vmatprep.subr.mxu0 0.0
  %13423 = vmatpush1.msra.mxu0 0.0
  %13424 = vmatprep.subr.mxu0 0.0
  %13425 = vmatpush1.msra.mxu0 0.0
  %13426 = vmatprep.subr.mxu0 0.0
  %13427 = vmatpush1.msra.mxu0 0.0
  %13428 = vmatprep.subr.mxu0 0.0
  %13429 = vmatpush1.msra.mxu0 0.0
  %13430 = vmatprep.subr.mxu0 0.0
  %13431 = vmatpush1.msra.mxu0 0.0
  %13432 = vmatprep.subr.mxu0 0.0
  %13433 = vmatpush1.msra.mxu0 0.0
  %13434 = vmatprep.subr.mxu0 0.0
  %13435 = vmatpush1.msra.mxu0 0.0
  %13436 = vmatprep.subr.mxu0 0.0
  %13437 = vmatpush1.msra.mxu0 0.0
  %13438 = vmatprep.subr.mxu0 0.0
  %13439 = vmatpush1.msra.mxu0 0.0
  %13440 = vmatprep.subr.mxu0 0.0
  %13441 = vmatpush1.msra.mxu0 0.0
  %13442 = vmatprep.subr.mxu0 0.0
  %13443 = vmatpush1.msra.mxu0 0.0
  %13444 = vmatprep.subr.mxu0 0.0
  %13445 = vmatpush1.msra.mxu0 0.0
  %13446 = vmatprep.subr.mxu0 0.0
  %13447 = vmatpush1.msra.mxu0 0.0
  %13448 = vmatprep.subr.mxu0 0.0
  %13449 = vmatpush1.msra.mxu0 0.0
  %13450 = vmatprep.subr.mxu0 0.0
  %13451 = vmatpush1.msra.mxu0 0.0
  %13452 = vmatprep.subr.mxu0 0.0
  %13453 = vmatpush1.msra.mxu0 0.0
  %13454 = vmatprep.subr.mxu0 0.0
  %13455 = vmatpush1.msra.mxu0 0.0
  %13456 = vmatprep.subr.mxu0 0.0
  %13457 = vmatpush1.msra.mxu0 0.0
  %13458 = vmatprep.subr.mxu0 0.0
  %13459 = vmatpush1.msra.mxu0 0.0
  %13460 = vmatprep.subr.mxu0 0.0
  %13461 = vmatpush1.msra.mxu0 0.0
  %13462 = vmatprep.subr.mxu0 0.0
  %13463 = vmatpush1.msra.mxu0 0.0
  %13464 = vmatprep.subr.mxu0 0.0
  %13465 = vmatpush1.msra.mxu0 0.0
  %13466 = vmatprep.subr.mxu0 0.0
  %13467 = vmatpush1.msra.mxu0 0.0
  %13468 = vmatprep.subr.mxu0 0.0
  %13469 = vmatpush1.msra.mxu0 0.0
  %13470 = vmatprep.subr.mxu0 0.0
  %13471 = vmatpush1.msra.mxu0 0.0
  %13472 = vmatprep.subr.mxu0 0.0
  %13473 = vmatpush1.msra.mxu0 0.0
  %13474 = vmatprep.mubr.f32.mxu0 0.0
  %13475 = vmatmul.mubr.f32.gmra.mrb[0].mxu0 %v12764
  %v13476 = vpop.f32.mrb[0].mxu0
  %v13477 = vadd.f32 0.0, %v13476
  %v13478 = vpop.f32.mrb[0].mxu0
  %v13479 = vadd.f32 0.0, %v13478
  %13480 = vdwg.mxu0
  %13481 = vmatprep.subr.mxu0 %v12804
  %13482 = vmatpush1.msra.mxu0 %v12802
  %13483 = vmatprep.subr.mxu0 0.0
  %13484 = vmatpush1.msra.mxu0 0.0
  %13485 = vmatprep.subr.mxu0 0.0
  %13486 = vmatpush1.msra.mxu0 0.0
  %13487 = vmatprep.subr.mxu0 0.0
  %13488 = vmatpush1.msra.mxu0 0.0
  %13489 = vmatprep.subr.mxu0 0.0
  %13490 = vmatpush1.msra.mxu0 0.0
  %13491 = vmatprep.subr.mxu0 0.0
  %13492 = vmatpush1.msra.mxu0 0.0
  %13493 = vmatprep.subr.mxu0 0.0
  %13494 = vmatpush1.msra.mxu0 0.0
  %13495 = vmatprep.subr.mxu0 0.0
  %13496 = vmatpush1.msra.mxu0 0.0
  %13497 = vmatprep.subr.mxu0 0.0
  %13498 = vmatpush1.msra.mxu0 0.0
  %13499 = vmatprep.subr.mxu0 0.0
  %13500 = vmatpush1.msra.mxu0 0.0
  %13501 = vmatprep.subr.mxu0 0.0
  %13502 = vmatpush1.msra.mxu0 0.0
  %13503 = vmatprep.subr.mxu0 0.0
  %13504 = vmatpush1.msra.mxu0 0.0
  %13505 = vmatprep.subr.mxu0 0.0
  %13506 = vmatpush1.msra.mxu0 0.0
  %13507 = vmatprep.subr.mxu0 0.0
  %13508 = vmatpush1.msra.mxu0 0.0
  %13509 = vmatprep.subr.mxu0 0.0
  %13510 = vmatpush1.msra.mxu0 0.0
  %13511 = vmatprep.subr.mxu0 0.0
  %13512 = vmatpush1.msra.mxu0 0.0
  %13513 = vmatprep.subr.mxu0 0.0
  %13514 = vmatpush1.msra.mxu0 0.0
  %13515 = vmatprep.subr.mxu0 0.0
  %13516 = vmatpush1.msra.mxu0 0.0
  %13517 = vmatprep.subr.mxu0 0.0
  %13518 = vmatpush1.msra.mxu0 0.0
  %13519 = vmatprep.subr.mxu0 0.0
  %13520 = vmatpush1.msra.mxu0 0.0
  %13521 = vmatprep.subr.mxu0 0.0
  %13522 = vmatpush1.msra.mxu0 0.0
  %13523 = vmatprep.subr.mxu0 0.0
  %13524 = vmatpush1.msra.mxu0 0.0
  %13525 = vmatprep.subr.mxu0 0.0
  %13526 = vmatpush1.msra.mxu0 0.0
  %13527 = vmatprep.subr.mxu0 0.0
  %13528 = vmatpush1.msra.mxu0 0.0
  %13529 = vmatprep.subr.mxu0 0.0
  %13530 = vmatpush1.msra.mxu0 0.0
  %13531 = vmatprep.subr.mxu0 0.0
  %13532 = vmatpush1.msra.mxu0 0.0
  %13533 = vmatprep.subr.mxu0 0.0
  %13534 = vmatpush1.msra.mxu0 0.0
  %13535 = vmatprep.subr.mxu0 0.0
  %13536 = vmatpush1.msra.mxu0 0.0
  %13537 = vmatprep.subr.mxu0 0.0
  %13538 = vmatpush1.msra.mxu0 0.0
  %13539 = vmatprep.subr.mxu0 0.0
  %13540 = vmatpush1.msra.mxu0 0.0
  %13541 = vmatprep.subr.mxu0 0.0
  %13542 = vmatpush1.msra.mxu0 0.0
  %13543 = vmatprep.subr.mxu0 0.0
  %13544 = vmatpush1.msra.mxu0 0.0
  %13545 = vmatprep.mubr.f32.mxu0 0.0
  %13546 = vmatmul.mubr.f32.gmra.mrb[0].mxu0 %v12764
  %v13547 = vpop.f32.mrb[0].mxu0
  %v13548 = vadd.f32 0.0, %v13547
  %v13549 = vpop.f32.mrb[0].mxu0
  %v13550 = vadd.f32 0.0, %v13549
  %13551 = vdwg.mxu0
  %13552 = vmatprep.subr.mxu0 %v12808
  %13553 = vmatpush1.msra.mxu0 %v12806
  %13554 = vmatprep.subr.mxu0 0.0
  %13555 = vmatpush1.msra.mxu0 0.0
  %13556 = vmatprep.subr.mxu0 0.0
  %13557 = vmatpush1.msra.mxu0 0.0
  %13558 = vmatprep.subr.mxu0 0.0
  %13559 = vmatpush1.msra.mxu0 0.0
  %13560 = vmatprep.subr.mxu0 0.0
  %13561 = vmatpush1.msra.mxu0 0.0
  %13562 = vmatprep.subr.mxu0 0.0
  %13563 = vmatpush1.msra.mxu0 0.0
  %13564 = vmatprep.subr.mxu0 0.0
  %13565 = vmatpush1.msra.mxu0 0.0
  %13566 = vmatprep.subr.mxu0 0.0
  %13567 = vmatpush1.msra.mxu0 0.0
  %13568 = vmatprep.subr.mxu0 0.0
  %13569 = vmatpush1.msra.mxu0 0.0
  %13570 = vmatprep.subr.mxu0 0.0
  %13571 = vmatpush1.msra.mxu0 0.0
  %13572 = vmatprep.subr.mxu0 0.0
  %13573 = vmatpush1.msra.mxu0 0.0
  %13574 = vmatprep.subr.mxu0 0.0
  %13575 = vmatpush1.msra.mxu0 0.0
  %13576 = vmatprep.subr.mxu0 0.0
  %13577 = vmatpush1.msra.mxu0 0.0
  %13578 = vmatprep.subr.mxu0 0.0
  %13579 = vmatpush1.msra.mxu0 0.0
  %13580 = vmatprep.subr.mxu0 0.0
  %13581 = vmatpush1.msra.mxu0 0.0
  %13582 = vmatprep.subr.mxu0 0.0
  %13583 = vmatpush1.msra.mxu0 0.0
  %13584 = vmatprep.subr.mxu0 0.0
  %13585 = vmatpush1.msra.mxu0 0.0
  %13586 = vmatprep.subr.mxu0 0.0
  %13587 = vmatpush1.msra.mxu0 0.0
  %13588 = vmatprep.subr.mxu0 0.0
  %13589 = vmatpush1.msra.mxu0 0.0
  %13590 = vmatprep.subr.mxu0 0.0
  %13591 = vmatpush1.msra.mxu0 0.0
  %13592 = vmatprep.subr.mxu0 0.0
  %13593 = vmatpush1.msra.mxu0 0.0
  %13594 = vmatprep.subr.mxu0 0.0
  %13595 = vmatpush1.msra.mxu0 0.0
  %13596 = vmatprep.subr.mxu0 0.0
  %13597 = vmatpush1.msra.mxu0 0.0
  %13598 = vmatprep.subr.mxu0 0.0
  %13599 = vmatpush1.msra.mxu0 0.0
  %13600 = vmatprep.subr.mxu0 0.0
  %13601 = vmatpush1.msra.mxu0 0.0
  %13602 = vmatprep.subr.mxu0 0.0
  %13603 = vmatpush1.msra.mxu0 0.0
  %13604 = vmatprep.subr.mxu0 0.0
  %13605 = vmatpush1.msra.mxu0 0.0
  %13606 = vmatprep.subr.mxu0 0.0
  %13607 = vmatpush1.msra.mxu0 0.0
  %13608 = vmatprep.subr.mxu0 0.0
  %13609 = vmatpush1.msra.mxu0 0.0
  %13610 = vmatprep.subr.mxu0 0.0
  %13611 = vmatpush1.msra.mxu0 0.0
  %13612 = vmatprep.subr.mxu0 0.0
  %13613 = vmatpush1.msra.mxu0 0.0
  %13614 = vmatprep.subr.mxu0 0.0
  %13615 = vmatpush1.msra.mxu0 0.0
  %13616 = vmatprep.mubr.f32.mxu0 0.0
  %13617 = vmatmul.mubr.f32.gmra.mrb[0].mxu0 %v12764
  %v13618 = vpop.f32.mrb[0].mxu0
  %v13619 = vadd.f32 0.0, %v13618
  %v13620 = vpop.f32.mrb[0].mxu0
  %v13621 = vadd.f32 0.0, %v13620
  %13622 = vdwg.mxu0
  %13623 = vmatprep.subr.mxu0 %v12812
  %13624 = vmatpush1.msra.mxu0 %v12810
  %13625 = vmatprep.subr.mxu0 0.0
  %13626 = vmatpush1.msra.mxu0 0.0
  %13627 = vmatprep.subr.mxu0 0.0
  %13628 = vmatpush1.msra.mxu0 0.0
  %13629 = vmatprep.subr.mxu0 0.0
  %13630 = vmatpush1.msra.mxu0 0.0
  %13631 = vmatprep.subr.mxu0 0.0
  %13632 = vmatpush1.msra.mxu0 0.0
  %13633 = vmatprep.subr.mxu0 0.0
  %13634 = vmatpush1.msra.mxu0 0.0
  %13635 = vmatprep.subr.mxu0 0.0
  %13636 = vmatpush1.msra.mxu0 0.0
  %13637 = vmatprep.subr.mxu0 0.0
  %13638 = vmatpush1.msra.mxu0 0.0
  %13639 = vmatprep.subr.mxu0 0.0
  %13640 = vmatpush1.msra.mxu0 0.0
  %13641 = vmatprep.subr.mxu0 0.0
  %13642 = vmatpush1.msra.mxu0 0.0
  %13643 = vmatprep.subr.mxu0 0.0
  %13644 = vmatpush1.msra.mxu0 0.0
  %13645 = vmatprep.subr.mxu0 0.0
  %13646 = vmatpush1.msra.mxu0 0.0
  %13647 = vmatprep.subr.mxu0 0.0
  %13648 = vmatpush1.msra.mxu0 0.0
  %13649 = vmatprep.subr.mxu0 0.0
  %13650 = vmatpush1.msra.mxu0 0.0
  %13651 = vmatprep.subr.mxu0 0.0
  %13652 = vmatpush1.msra.mxu0 0.0
  %13653 = vmatprep.subr.mxu0 0.0
  %13654 = vmatpush1.msra.mxu0 0.0
  %13655 = vmatprep.subr.mxu0 0.0
  %13656 = vmatpush1.msra.mxu0 0.0
  %13657 = vmatprep.subr.mxu0 0.0
  %13658 = vmatpush1.msra.mxu0 0.0
  %13659 = vmatprep.subr.mxu0 0.0
  %13660 = vmatpush1.msra.mxu0 0.0
  %13661 = vmatprep.subr.mxu0 0.0
  %13662 = vmatpush1.msra.mxu0 0.0
  %13663 = vmatprep.subr.mxu0 0.0
  %13664 = vmatpush1.msra.mxu0 0.0
  %13665 = vmatprep.subr.mxu0 0.0
  %13666 = vmatpush1.msra.mxu0 0.0
  %13667 = vmatprep.subr.mxu0 0.0
  %13668 = vmatpush1.msra.mxu0 0.0
  %13669 = vmatprep.subr.mxu0 0.0
  %13670 = vmatpush1.msra.mxu0 0.0
  %13671 = vmatprep.subr.mxu0 0.0
  %13672 = vmatpush1.msra.mxu0 0.0
  %13673 = vmatprep.subr.mxu0 0.0
  %13674 = vmatpush1.msra.mxu0 0.0
  %13675 = vmatprep.subr.mxu0 0.0
  %13676 = vmatpush1.msra.mxu0 0.0
  %13677 = vmatprep.subr.mxu0 0.0
  %13678 = vmatpush1.msra.mxu0 0.0
  %13679 = vmatprep.subr.mxu0 0.0
  %13680 = vmatpush1.msra.mxu0 0.0
  %13681 = vmatprep.subr.mxu0 0.0
  %13682 = vmatpush1.msra.mxu0 0.0
  %13683 = vmatprep.subr.mxu0 0.0
  %13684 = vmatpush1.msra.mxu0 0.0
  %13685 = vmatprep.subr.mxu0 0.0
  %13686 = vmatpush1.msra.mxu0 0.0
  %13687 = vmatprep.mubr.f32.mxu0 0.0
  %13688 = vmatmul.mubr.f32.gmra.mrb[0].mxu0 %v12764
  %v13689 = vpop.f32.mrb[0].mxu0
  %v13690 = vadd.f32 0.0, %v13689
  %v13691 = vpop.f32.mrb[0].mxu0
  %v13692 = vadd.f32 0.0, %v13691
  %13693 = vdwg.mxu0
  %13694 = vmatprep.subr.mxu0 %v12816
  %13695 = vmatpush1.msra.mxu0 %v12814
  %13696 = vmatprep.subr.mxu0 0.0
  %13697 = vmatpush1.msra.mxu0 0.0
  %13698 = vmatprep.subr.mxu0 0.0
  %13699 = vmatpush1.msra.mxu0 0.0
  %13700 = vmatprep.subr.mxu0 0.0
  %13701 = vmatpush1.msra.mxu0 0.0
  %13702 = vmatprep.subr.mxu0 0.0
  %13703 = vmatpush1.msra.mxu0 0.0
  %13704 = vmatprep.subr.mxu0 0.0
  %13705 = vmatpush1.msra.mxu0 0.0
  %13706 = vmatprep.subr.mxu0 0.0
  %13707 = vmatpush1.msra.mxu0 0.0
  %13708 = vmatprep.subr.mxu0 0.0
  %13709 = vmatpush1.msra.mxu0 0.0
  %13710 = vmatprep.subr.mxu0 0.0
  %13711 = vmatpush1.msra.mxu0 0.0
  %13712 = vmatprep.subr.mxu0 0.0
  %13713 = vmatpush1.msra.mxu0 0.0
  %13714 = vmatprep.subr.mxu0 0.0
  %13715 = vmatpush1.msra.mxu0 0.0
  %13716 = vmatprep.subr.mxu0 0.0
  %13717 = vmatpush1.msra.mxu0 0.0
  %13718 = vmatprep.subr.mxu0 0.0
  %13719 = vmatpush1.msra.mxu0 0.0
  %13720 = vmatprep.subr.mxu0 0.0
  %13721 = vmatpush1.msra.mxu0 0.0
  %13722 = vmatprep.subr.mxu0 0.0
  %13723 = vmatpush1.msra.mxu0 0.0
  %13724 = vmatprep.subr.mxu0 0.0
  %13725 = vmatpush1.msra.mxu0 0.0
  %13726 = vmatprep.subr.mxu0 0.0
  %13727 = vmatpush1.msra.mxu0 0.0
  %13728 = vmatprep.subr.mxu0 0.0
  %13729 = vmatpush1.msra.mxu0 0.0
  %13730 = vmatprep.subr.mxu0 0.0
  %13731 = vmatpush1.msra.mxu0 0.0
  %13732 = vmatprep.subr.mxu0 0.0
  %13733 = vmatpush1.msra.mxu0 0.0
  %13734 = vmatprep.subr.mxu0 0.0
  %13735 = vmatpush1.msra.mxu0 0.0
  %13736 = vmatprep.subr.mxu0 0.0
  %13737 = vmatpush1.msra.mxu0 0.0
  %13738 = vmatprep.subr.mxu0 0.0
  %13739 = vmatpush1.msra.mxu0 0.0
  %13740 = vmatprep.subr.mxu0 0.0
  %13741 = vmatpush1.msra.mxu0 0.0
  %13742 = vmatprep.subr.mxu0 0.0
  %13743 = vmatpush1.msra.mxu0 0.0
  %13744 = vmatprep.subr.mxu0 0.0
  %13745 = vmatpush1.msra.mxu0 0.0
  %13746 = vmatprep.subr.mxu0 0.0
  %13747 = vmatpush1.msra.mxu0 0.0
  %13748 = vmatprep.subr.mxu0 0.0
  %13749 = vmatpush1.msra.mxu0 0.0
  %13750 = vmatprep.subr.mxu0 0.0
  %13751 = vmatpush1.msra.mxu0 0.0
  %13752 = vmatprep.subr.mxu0 0.0
  %13753 = vmatpush1.msra.mxu0 0.0
  %13754 = vmatprep.subr.mxu0 0.0
  %13755 = vmatpush1.msra.mxu0 0.0
  %13756 = vmatprep.subr.mxu0 0.0
  %13757 = vmatpush1.msra.mxu0 0.0
  %13758 = vmatprep.mubr.f32.mxu0 0.0
  %13759 = vmatmul.mubr.f32.gmra.mrb[0].mxu0 %v12764
  %v13760 = vpop.f32.mrb[0].mxu0
  %v13761 = vadd.f32 0.0, %v13760
  %v13762 = vpop.f32.mrb[0].mxu0
  %v13763 = vadd.f32 0.0, %v13762
  %13764 = vdwg.mxu0
  %13765 = vmatprep.subr.mxu0 %v12820
  %13766 = vmatpush1.msra.mxu0 %v12818
  %13767 = vmatprep.subr.mxu0 0.0
  %13768 = vmatpush1.msra.mxu0 0.0
  %13769 = vmatprep.subr.mxu0 0.0
  %13770 = vmatpush1.msra.mxu0 0.0
  %13771 = vmatprep.subr.mxu0 0.0
  %13772 = vmatpush1.msra.mxu0 0.0
  %13773 = vmatprep.subr.mxu0 0.0
  %13774 = vmatpush1.msra.mxu0 0.0
  %13775 = vmatprep.subr.mxu0 0.0
  %13776 = vmatpush1.msra.mxu0 0.0
  %13777 = vmatprep.subr.mxu0 0.0
  %13778 = vmatpush1.msra.mxu0 0.0
  %13779 = vmatprep.subr.mxu0 0.0
  %13780 = vmatpush1.msra.mxu0 0.0
  %13781 = vmatprep.subr.mxu0 0.0
  %13782 = vmatpush1.msra.mxu0 0.0
  %13783 = vmatprep.subr.mxu0 0.0
  %13784 = vmatpush1.msra.mxu0 0.0
  %13785 = vmatprep.subr.mxu0 0.0
  %13786 = vmatpush1.msra.mxu0 0.0
  %13787 = vmatprep.subr.mxu0 0.0
  %13788 = vmatpush1.msra.mxu0 0.0
  %13789 = vmatprep.subr.mxu0 0.0
  %13790 = vmatpush1.msra.mxu0 0.0
  %13791 = vmatprep.subr.mxu0 0.0
  %13792 = vmatpush1.msra.mxu0 0.0
  %13793 = vmatprep.subr.mxu0 0.0
  %13794 = vmatpush1.msra.mxu0 0.0
  %13795 = vmatprep.subr.mxu0 0.0
  %13796 = vmatpush1.msra.mxu0 0.0
  %13797 = vmatprep.subr.mxu0 0.0
  %13798 = vmatpush1.msra.mxu0 0.0
  %13799 = vmatprep.subr.mxu0 0.0
  %13800 = vmatpush1.msra.mxu0 0.0
  %13801 = vmatprep.subr.mxu0 0.0
  %13802 = vmatpush1.msra.mxu0 0.0
  %13803 = vmatprep.subr.mxu0 0.0
  %13804 = vmatpush1.msra.mxu0 0.0
  %13805 = vmatprep.subr.mxu0 0.0
  %13806 = vmatpush1.msra.mxu0 0.0
  %13807 = vmatprep.subr.mxu0 0.0
  %13808 = vmatpush1.msra.mxu0 0.0
  %13809 = vmatprep.subr.mxu0 0.0
  %13810 = vmatpush1.msra.mxu0 0.0
  %13811 = vmatprep.subr.mxu0 0.0
  %13812 = vmatpush1.msra.mxu0 0.0
  %13813 = vmatprep.subr.mxu0 0.0
  %13814 = vmatpush1.msra.mxu0 0.0
  %13815 = vmatprep.subr.mxu0 0.0
  %13816 = vmatpush1.msra.mxu0 0.0
  %13817 = vmatprep.subr.mxu0 0.0
  %13818 = vmatpush1.msra.mxu0 0.0
  %13819 = vmatprep.subr.mxu0 0.0
  %13820 = vmatpush1.msra.mxu0 0.0
  %13821 = vmatprep.subr.mxu0 0.0
  %13822 = vmatpush1.msra.mxu0 0.0
  %13823 = vmatprep.subr.mxu0 0.0
  %13824 = vmatpush1.msra.mxu0 0.0
  %13825 = vmatprep.subr.mxu0 0.0
  %13826 = vmatpush1.msra.mxu0 0.0
  %13827 = vmatprep.subr.mxu0 0.0
  %13828 = vmatpush1.msra.mxu0 0.0
  %13829 = vmatprep.mubr.f32.mxu0 0.0
  %13830 = vmatmul.mubr.f32.gmra.mrb[0].mxu0 %v12764
  %v13831 = vpop.f32.mrb[0].mxu0
  %v13832 = vadd.f32 0.0, %v13831
  %v13833 = vpop.f32.mrb[0].mxu0
  %v13834 = vadd.f32 0.0, %v13833
  %13835 = vdwg.mxu0
  %13836 = vmatprep.subr.mxu0 %v12824
  %13837 = vmatpush1.msra.mxu0 %v12822
  %13838 = vmatprep.subr.mxu0 0.0
  %13839 = vmatpush1.msra.mxu0 0.0
  %13840 = vmatprep.subr.mxu0 0.0
  %13841 = vmatpush1.msra.mxu0 0.0
  %13842 = vmatprep.subr.mxu0 0.0
  %13843 = vmatpush1.msra.mxu0 0.0
  %13844 = vmatprep.subr.mxu0 0.0
  %13845 = vmatpush1.msra.mxu0 0.0
  %13846 = vmatprep.subr.mxu0 0.0
  %13847 = vmatpush1.msra.mxu0 0.0
  %13848 = vmatprep.subr.mxu0 0.0
  %13849 = vmatpush1.msra.mxu0 0.0
  %13850 = vmatprep.subr.mxu0 0.0
  %13851 = vmatpush1.msra.mxu0 0.0
  %13852 = vmatprep.subr.mxu0 0.0
  %13853 = vmatpush1.msra.mxu0 0.0
  %13854 = vmatprep.subr.mxu0 0.0
  %13855 = vmatpush1.msra.mxu0 0.0
  %13856 = vmatprep.subr.mxu0 0.0
  %13857 = vmatpush1.msra.mxu0 0.0
  %13858 = vmatprep.subr.mxu0 0.0
  %13859 = vmatpush1.msra.mxu0 0.0
  %13860 = vmatprep.subr.mxu0 0.0
  %13861 = vmatpush1.msra.mxu0 0.0
  %13862 = vmatprep.subr.mxu0 0.0
  %13863 = vmatpush1.msra.mxu0 0.0
  %13864 = vmatprep.subr.mxu0 0.0
  %13865 = vmatpush1.msra.mxu0 0.0
  %13866 = vmatprep.subr.mxu0 0.0
  %13867 = vmatpush1.msra.mxu0 0.0
  %13868 = vmatprep.subr.mxu0 0.0
  %13869 = vmatpush1.msra.mxu0 0.0
  %13870 = vmatprep.subr.mxu0 0.0
  %13871 = vmatpush1.msra.mxu0 0.0
  %13872 = vmatprep.subr.mxu0 0.0
  %13873 = vmatpush1.msra.mxu0 0.0
  %13874 = vmatprep.subr.mxu0 0.0
  %13875 = vmatpush1.msra.mxu0 0.0
  %13876 = vmatprep.subr.mxu0 0.0
  %13877 = vmatpush1.msra.mxu0 0.0
  %13878 = vmatprep.subr.mxu0 0.0
  %13879 = vmatpush1.msra.mxu0 0.0
  %13880 = vmatprep.subr.mxu0 0.0
  %13881 = vmatpush1.msra.mxu0 0.0
  %13882 = vmatprep.subr.mxu0 0.0
  %13883 = vmatpush1.msra.mxu0 0.0
  %13884 = vmatprep.subr.mxu0 0.0
  %13885 = vmatpush1.msra.mxu0 0.0
  %13886 = vmatprep.subr.mxu0 0.0
  %13887 = vmatpush1.msra.mxu0 0.0
  %13888 = vmatprep.subr.mxu0 0.0
  %13889 = vmatpush1.msra.mxu0 0.0
  %13890 = vmatprep.subr.mxu0 0.0
  %13891 = vmatpush1.msra.mxu0 0.0
  %13892 = vmatprep.subr.mxu0 0.0
  %13893 = vmatpush1.msra.mxu0 0.0
  %13894 = vmatprep.subr.mxu0 0.0
  %13895 = vmatpush1.msra.mxu0 0.0
  %13896 = vmatprep.subr.mxu0 0.0
  %13897 = vmatpush1.msra.mxu0 0.0
  %13898 = vmatprep.subr.mxu0 0.0
  %13899 = vmatpush1.msra.mxu0 0.0
  %13900 = vmatprep.mubr.f32.mxu0 0.0
  %13901 = vmatmul.mubr.f32.gmra.mrb[0].mxu0 %v12764
  %v13902 = vpop.f32.mrb[0].mxu0
  %v13903 = vadd.f32 0.0, %v13902
  %v13904 = vpop.f32.mrb[0].mxu0
  %v13905 = vadd.f32 0.0, %v13904
  %13906 = vdwg.mxu0
  %13907 = vmatprep.subr.mxu0 %v12828
  %13908 = vmatpush1.msra.mxu0 %v12826
  %13909 = vmatprep.subr.mxu0 0.0
  %13910 = vmatpush1.msra.mxu0 0.0
  %13911 = vmatprep.subr.mxu0 0.0
  %13912 = vmatpush1.msra.mxu0 0.0
  %13913 = vmatprep.subr.mxu0 0.0
  %13914 = vmatpush1.msra.mxu0 0.0
  %13915 = vmatprep.subr.mxu0 0.0
  %13916 = vmatpush1.msra.mxu0 0.0
  %13917 = vmatprep.subr.mxu0 0.0
  %13918 = vmatpush1.msra.mxu0 0.0
  %13919 = vmatprep.subr.mxu0 0.0
  %13920 = vmatpush1.msra.mxu0 0.0
  %13921 = vmatprep.subr.mxu0 0.0
  %13922 = vmatpush1.msra.mxu0 0.0
  %13923 = vmatprep.subr.mxu0 0.0
  %13924 = vmatpush1.msra.mxu0 0.0
  %13925 = vmatprep.subr.mxu0 0.0
  %13926 = vmatpush1.msra.mxu0 0.0
  %13927 = vmatprep.subr.mxu0 0.0
  %13928 = vmatpush1.msra.mxu0 0.0
  %13929 = vmatprep.subr.mxu0 0.0
  %13930 = vmatpush1.msra.mxu0 0.0
  %13931 = vmatprep.subr.mxu0 0.0
  %13932 = vmatpush1.msra.mxu0 0.0
  %13933 = vmatprep.subr.mxu0 0.0
  %13934 = vmatpush1.msra.mxu0 0.0
  %13935 = vmatprep.subr.mxu0 0.0
  %13936 = vmatpush1.msra.mxu0 0.0
  %13937 = vmatprep.subr.mxu0 0.0
  %13938 = vmatpush1.msra.mxu0 0.0
  %13939 = vmatprep.subr.mxu0 0.0
  %13940 = vmatpush1.msra.mxu0 0.0
  %13941 = vmatprep.subr.mxu0 0.0
  %13942 = vmatpush1.msra.mxu0 0.0
  %13943 = vmatprep.subr.mxu0 0.0
  %13944 = vmatpush1.msra.mxu0 0.0
  %13945 = vmatprep.subr.mxu0 0.0
  %13946 = vmatpush1.msra.mxu0 0.0
  %13947 = vmatprep.subr.mxu0 0.0
  %13948 = vmatpush1.msra.mxu0 0.0
  %13949 = vmatprep.subr.mxu0 0.0
  %13950 = vmatpush1.msra.mxu0 0.0
  %13951 = vmatprep.subr.mxu0 0.0
  %13952 = vmatpush1.msra.mxu0 0.0
  %13953 = vmatprep.subr.mxu0 0.0
  %13954 = vmatpush1.msra.mxu0 0.0
  %13955 = vmatprep.subr.mxu0 0.0
  %13956 = vmatpush1.msra.mxu0 0.0
  %13957 = vmatprep.subr.mxu0 0.0
  %13958 = vmatpush1.msra.mxu0 0.0
  %13959 = vmatprep.subr.mxu0 0.0
  %13960 = vmatpush1.msra.mxu0 0.0
  %13961 = vmatprep.subr.mxu0 0.0
  %13962 = vmatpush1.msra.mxu0 0.0
  %13963 = vmatprep.subr.mxu0 0.0
  %13964 = vmatpush1.msra.mxu0 0.0
  %13965 = vmatprep.subr.mxu0 0.0
  %13966 = vmatpush1.msra.mxu0 0.0
  %13967 = vmatprep.subr.mxu0 0.0
  %13968 = vmatpush1.msra.mxu0 0.0
  %13969 = vmatprep.subr.mxu0 0.0
  %13970 = vmatpush1.msra.mxu0 0.0
  %13971 = vmatprep.mubr.f32.mxu0 0.0
  %13972 = vmatmul.mubr.f32.gmra.mrb[0].mxu0 %v12764
  %v13973 = vpop.f32.mrb[0].mxu0
  %v13974 = vadd.f32 0.0, %v13973
  %v13975 = vpop.f32.mrb[0].mxu0
  %v13976 = vadd.f32 0.0, %v13975
  %13977 = vdwg.mxu0
  %13978 = vmatprep.subr.mxu0 %v12832
  %13979 = vmatpush1.msra.mxu0 %v12830
  %13980 = vmatprep.subr.mxu0 0.0
  %13981 = vmatpush1.msra.mxu0 0.0
  %13982 = vmatprep.subr.mxu0 0.0
  %13983 = vmatpush1.msra.mxu0 0.0
  %13984 = vmatprep.subr.mxu0 0.0
  %13985 = vmatpush1.msra.mxu0 0.0
  %13986 = vmatprep.subr.mxu0 0.0
  %13987 = vmatpush1.msra.mxu0 0.0
  %13988 = vmatprep.subr.mxu0 0.0
  %13989 = vmatpush1.msra.mxu0 0.0
  %13990 = vmatprep.subr.mxu0 0.0
  %13991 = vmatpush1.msra.mxu0 0.0
  %13992 = vmatprep.subr.mxu0 0.0
  %13993 = vmatpush1.msra.mxu0 0.0
  %13994 = vmatprep.subr.mxu0 0.0
  %13995 = vmatpush1.msra.mxu0 0.0
  %13996 = vmatprep.subr.mxu0 0.0
  %13997 = vmatpush1.msra.mxu0 0.0
  %13998 = vmatprep.subr.mxu0 0.0
  %13999 = vmatpush1.msra.mxu0 0.0
  %14000 = vmatprep.subr.mxu0 0.0
  %14001 = vmatpush1.msra.mxu0 0.0
  %14002 = vmatprep.subr.mxu0 0.0
  %14003 = vmatpush1.msra.mxu0 0.0
  %14004 = vmatprep.subr.mxu0 0.0
  %14005 = vmatpush1.msra.mxu0 0.0
  %14006 = vmatprep.subr.mxu0 0.0
  %14007 = vmatpush1.msra.mxu0 0.0
  %14008 = vmatprep.subr.mxu0 0.0
  %14009 = vmatpush1.msra.mxu0 0.0
  %14010 = vmatprep.subr.mxu0 0.0
  %14011 = vmatpush1.msra.mxu0 0.0
  %14012 = vmatprep.subr.mxu0 0.0
  %14013 = vmatpush1.msra.mxu0 0.0
  %14014 = vmatprep.subr.mxu0 0.0
  %14015 = vmatpush1.msra.mxu0 0.0
  %14016 = vmatprep.subr.mxu0 0.0
  %14017 = vmatpush1.msra.mxu0 0.0
  %14018 = vmatprep.subr.mxu0 0.0
  %14019 = vmatpush1.msra.mxu0 0.0
  %14020 = vmatprep.subr.mxu0 0.0
  %14021 = vmatpush1.msra.mxu0 0.0
  %14022 = vmatprep.subr.mxu0 0.0
  %14023 = vmatpush1.msra.mxu0 0.0
  %14024 = vmatprep.subr.mxu0 0.0
  %14025 = vmatpush1.msra.mxu0 0.0
  %14026 = vmatprep.subr.mxu0 0.0
  %14027 = vmatpush1.msra.mxu0 0.0
  %14028 = vmatprep.subr.mxu0 0.0
  %14029 = vmatpush1.msra.mxu0 0.0
  %14030 = vmatprep.subr.mxu0 0.0
  %14031 = vmatpush1.msra.mxu0 0.0
  %14032 = vmatprep.subr.mxu0 0.0
  %14033 = vmatpush1.msra.mxu0 0.0
  %14034 = vmatprep.subr.mxu0 0.0
  %14035 = vmatpush1.msra.mxu0 0.0
  %14036 = vmatprep.subr.mxu0 0.0
  %14037 = vmatpush1.msra.mxu0 0.0
  %14038 = vmatprep.subr.mxu0 0.0
  %14039 = vmatpush1.msra.mxu0 0.0
  %14040 = vmatprep.subr.mxu0 0.0
  %14041 = vmatpush1.msra.mxu0 0.0
  %14042 = vmatprep.mubr.f32.mxu0 0.0
  %14043 = vmatmul.mubr.f32.gmra.mrb[0].mxu0 %v12764
  %v14044 = vpop.f32.mrb[0].mxu0
  %v14045 = vadd.f32 0.0, %v14044
  %v14046 = vpop.f32.mrb[0].mxu0
  %v14047 = vadd.f32 0.0, %v14046
  %14048 = vdwg.mxu0
  %14049 = vmatprep.subr.mxu0 %v12836
  %14050 = vmatpush1.msra.mxu0 %v12834
  %14051 = vmatprep.subr.mxu0 0.0
  %14052 = vmatpush1.msra.mxu0 0.0
  %14053 = vmatprep.subr.mxu0 0.0
  %14054 = vmatpush1.msra.mxu0 0.0
  %14055 = vmatprep.subr.mxu0 0.0
  %14056 = vmatpush1.msra.mxu0 0.0
  %14057 = vmatprep.subr.mxu0 0.0
  %14058 = vmatpush1.msra.mxu0 0.0
  %14059 = vmatprep.subr.mxu0 0.0
  %14060 = vmatpush1.msra.mxu0 0.0
  %14061 = vmatprep.subr.mxu0 0.0
  %14062 = vmatpush1.msra.mxu0 0.0
  %14063 = vmatprep.subr.mxu0 0.0
  %14064 = vmatpush1.msra.mxu0 0.0
  %14065 = vmatprep.subr.mxu0 0.0
  %14066 = vmatpush1.msra.mxu0 0.0
  %14067 = vmatprep.subr.mxu0 0.0
  %14068 = vmatpush1.msra.mxu0 0.0
  %14069 = vmatprep.subr.mxu0 0.0
  %14070 = vmatpush1.msra.mxu0 0.0
  %14071 = vmatprep.subr.mxu0 0.0
  %14072 = vmatpush1.msra.mxu0 0.0
  %14073 = vmatprep.subr.mxu0 0.0
  %14074 = vmatpush1.msra.mxu0 0.0
  %14075 = vmatprep.subr.mxu0 0.0
  %14076 = vmatpush1.msra.mxu0 0.0
  %14077 = vmatprep.subr.mxu0 0.0
  %14078 = vmatpush1.msra.mxu0 0.0
  %14079 = vmatprep.subr.mxu0 0.0
  %14080 = vmatpush1.msra.mxu0 0.0
  %14081 = vmatprep.subr.mxu0 0.0
  %14082 = vmatpush1.msra.mxu0 0.0
  %14083 = vmatprep.subr.mxu0 0.0
  %14084 = vmatpush1.msra.mxu0 0.0
  %14085 = vmatprep.subr.mxu0 0.0
  %14086 = vmatpush1.msra.mxu0 0.0
  %14087 = vmatprep.subr.mxu0 0.0
  %14088 = vmatpush1.msra.mxu0 0.0
  %14089 = vmatprep.subr.mxu0 0.0
  %14090 = vmatpush1.msra.mxu0 0.0
  %14091 = vmatprep.subr.mxu0 0.0
  %14092 = vmatpush1.msra.mxu0 0.0
  %14093 = vmatprep.subr.mxu0 0.0
  %14094 = vmatpush1.msra.mxu0 0.0
  %14095 = vmatprep.subr.mxu0 0.0
  %14096 = vmatpush1.msra.mxu0 0.0
  %14097 = vmatprep.subr.mxu0 0.0
  %14098 = vmatpush1.msra.mxu0 0.0
  %14099 = vmatprep.subr.mxu0 0.0
  %14100 = vmatpush1.msra.mxu0 0.0
  %14101 = vmatprep.subr.mxu0 0.0
  %14102 = vmatpush1.msra.mxu0 0.0
  %14103 = vmatprep.subr.mxu0 0.0
  %14104 = vmatpush1.msra.mxu0 0.0
  %14105 = vmatprep.subr.mxu0 0.0
  %14106 = vmatpush1.msra.mxu0 0.0
  %14107 = vmatprep.subr.mxu0 0.0
  %14108 = vmatpush1.msra.mxu0 0.0
  %14109 = vmatprep.subr.mxu0 0.0
  %14110 = vmatpush1.msra.mxu0 0.0
  %14111 = vmatprep.subr.mxu0 0.0
  %14112 = vmatpush1.msra.mxu0 0.0
  %14113 = vmatprep.mubr.f32.mxu0 0.0
  %14114 = vmatmul.mubr.f32.gmra.mrb[0].mxu0 %v12764
  %v14115 = vpop.f32.mrb[0].mxu0
  %v14116 = vadd.f32 0.0, %v14115
  %v14117 = vpop.f32.mrb[0].mxu0
  %v14118 = vadd.f32 0.0, %v14117
  %14119 = vdwg.mxu0
  %14120 = vmatprep.subr.mxu0 %v12840
  %14121 = vmatpush1.msra.mxu0 %v12838
  %14122 = vmatprep.subr.mxu0 0.0
  %14123 = vmatpush1.msra.mxu0 0.0
  %14124 = vmatprep.subr.mxu0 0.0
  %14125 = vmatpush1.msra.mxu0 0.0
  %14126 = vmatprep.subr.mxu0 0.0
  %14127 = vmatpush1.msra.mxu0 0.0
  %14128 = vmatprep.subr.mxu0 0.0
  %14129 = vmatpush1.msra.mxu0 0.0
  %14130 = vmatprep.subr.mxu0 0.0
  %14131 = vmatpush1.msra.mxu0 0.0
  %14132 = vmatprep.subr.mxu0 0.0
  %14133 = vmatpush1.msra.mxu0 0.0
  %14134 = vmatprep.subr.mxu0 0.0
  %14135 = vmatpush1.msra.mxu0 0.0
  %14136 = vmatprep.subr.mxu0 0.0
  %14137 = vmatpush1.msra.mxu0 0.0
  %14138 = vmatprep.subr.mxu0 0.0
  %14139 = vmatpush1.msra.mxu0 0.0
  %14140 = vmatprep.subr.mxu0 0.0
  %14141 = vmatpush1.msra.mxu0 0.0
  %14142 = vmatprep.subr.mxu0 0.0
  %14143 = vmatpush1.msra.mxu0 0.0
  %14144 = vmatprep.subr.mxu0 0.0
  %14145 = vmatpush1.msra.mxu0 0.0
  %14146 = vmatprep.subr.mxu0 0.0
  %14147 = vmatpush1.msra.mxu0 0.0
  %14148 = vmatprep.subr.mxu0 0.0
  %14149 = vmatpush1.msra.mxu0 0.0
  %14150 = vmatprep.subr.mxu0 0.0
  %14151 = vmatpush1.msra.mxu0 0.0
  %14152 = vmatprep.subr.mxu0 0.0
  %14153 = vmatpush1.msra.mxu0 0.0
  %14154 = vmatprep.subr.mxu0 0.0
  %14155 = vmatpush1.msra.mxu0 0.0
  %14156 = vmatprep.subr.mxu0 0.0
  %14157 = vmatpush1.msra.mxu0 0.0
  %14158 = vmatprep.subr.mxu0 0.0
  %14159 = vmatpush1.msra.mxu0 0.0
  %14160 = vmatprep.subr.mxu0 0.0
  %14161 = vmatpush1.msra.mxu0 0.0
  %14162 = vmatprep.subr.mxu0 0.0
  %14163 = vmatpush1.msra.mxu0 0.0
  %14164 = vmatprep.subr.mxu0 0.0
  %14165 = vmatpush1.msra.mxu0 0.0
  %14166 = vmatprep.subr.mxu0 0.0
  %14167 = vmatpush1.msra.mxu0 0.0
  %14168 = vmatprep.subr.mxu0 0.0
  %14169 = vmatpush1.msra.mxu0 0.0
  %14170 = vmatprep.subr.mxu0 0.0
  %14171 = vmatpush1.msra.mxu0 0.0
  %14172 = vmatprep.subr.mxu0 0.0
  %14173 = vmatpush1.msra.mxu0 0.0
  %14174 = vmatprep.subr.mxu0 0.0
  %14175 = vmatpush1.msra.mxu0 0.0
  %14176 = vmatprep.subr.mxu0 0.0
  %14177 = vmatpush1.msra.mxu0 0.0
  %14178 = vmatprep.subr.mxu0 0.0
  %14179 = vmatpush1.msra.mxu0 0.0
  %14180 = vmatprep.subr.mxu0 0.0
  %14181 = vmatpush1.msra.mxu0 0.0
  %14182 = vmatprep.subr.mxu0 0.0
  %14183 = vmatpush1.msra.mxu0 0.0
  %14184 = vmatprep.mubr.f32.mxu0 0.0
  %14185 = vmatmul.mubr.f32.gmra.mrb[0].mxu0 %v12764
  %v14186 = vpop.f32.mrb[0].mxu0
  %v14187 = vadd.f32 0.0, %v14186
  %v14188 = vpop.f32.mrb[0].mxu0
  %v14189 = vadd.f32 0.0, %v14188
  %14190 = vdwg.mxu0
  %v14191 = vadd.f32 %v12606, %v12909
  %v14192 = vadd.f32 %v12607, %v12911
  %v14193 = vadd.f32 %v12608, %v12980
  %v14194 = vadd.f32 %v12609, %v12982
  %v14195 = vadd.f32 %v12610, %v13051
  %v14196 = vadd.f32 %v12611, %v13053
  %v14197 = vadd.f32 %v12612, %v13122
  %v14198 = vadd.f32 %v12613, %v13124
  %v14199 = vadd.f32 %v12614, %v13193
  %v14200 = vadd.f32 %v12615, %v13195
  %v14201 = vadd.f32 %v12616, %v13264
  %v14202 = vadd.f32 %v12617, %v13266
  %v14203 = vadd.f32 %v12618, %v13335
  %v14204 = vadd.f32 %v12619, %v13337
  %v14205 = vadd.f32 %v12620, %v13406
  %v14206 = vadd.f32 %v12621, %v13408
  %v14207 = vadd.f32 %v12622, %v13477
  %v14208 = vadd.f32 %v12623, %v13479
  %v14209 = vadd.f32 %v12624, %v13548
  %v14210 = vadd.f32 %v12625, %v13550
  %v14211 = vadd.f32 %v12626, %v13619
  %v14212 = vadd.f32 %v12627, %v13621
  %v14213 = vadd.f32 %v12628, %v13690
  %v14214 = vadd.f32 %v12629, %v13692
  %v14215 = vadd.f32 %v12630, %v13761
  %v14216 = vadd.f32 %v12631, %v13763
  %v14217 = vadd.f32 %v12632, %v13832
  %v14218 = vadd.f32 %v12633, %v13834
  %v14219 = vadd.f32 %v12634, %v13903
  %v14220 = vadd.f32 %v12635, %v13905
  %v14221 = vadd.f32 %v12636, %v13974
  %v14222 = vadd.f32 %v12637, %v13976
  %v14223 = vadd.f32 %v12638, %v14045
  %v14224 = vadd.f32 %v12639, %v14047
  %v14225 = vadd.f32 %v12640, %v14116
  %v14226 = vadd.f32 %v12641, %v14118
  %v14227 = vadd.f32 %v12642, %v14187
  %v14228 = vadd.f32 %v12643, %v14189
  %14229 = vst [vmem:[%s3] sm:$0xff] %v14191
  %14230 = vst [vmem:[%s3 + $0x8] sm:$0xff] %v14192
  %14231 = vst [vmem:[%s3 + $0x10] sm:$0xff] %v14193
  %14232 = vst [vmem:[%s3 + $0x18] sm:$0xff] %v14194
  %14233 = vst [vmem:[%s3 + $0x20] sm:$0xff] %v14195
  %14234 = vst [vmem:[%s3 + $0x28] sm:$0xff] %v14196
  %14235 = vst [vmem:[%s3 + $0x30] sm:$0xff] %v14197
  %14236 = vst [vmem:[%s3 + $0x38] sm:$0xff] %v14198
  %14237 = vst [vmem:[%s3 + $0x40] sm:$0xff] %v14199
  %14238 = vst [vmem:[%s3 + $0x48] sm:$0xff] %v14200
  %14239 = vst [vmem:[%s3 + $0x50] sm:$0xff] %v14201
  %14240 = vst [vmem:[%s3 + $0x58] sm:$0xff] %v14202
  %14241 = vst [vmem:[%s3 + $0x60] sm:$0xff] %v14203
  %14242 = vst [vmem:[%s3 + $0x68] sm:$0xff] %v14204
  %14243 = vst [vmem:[%s3 + $0x70] sm:$0xff] %v14205
  %14244 = vst [vmem:[%s3 + $0x78] sm:$0xff] %v14206
  %14245 = vst [vmem:[%s3 + $0x80] sm:$0xff] %v14207
  %14246 = vst [vmem:[%s3 + $0x88] sm:$0xff] %v14208
  %14247 = vst [vmem:[%s3 + $0x90] sm:$0xff] %v14209
  %14248 = vst [vmem:[%s3 + $0x98] sm:$0xff] %v14210
  %14249 = vst [vmem:[%s3 + $0xa0] sm:$0xff] %v14211
  %14250 = vst [vmem:[%s3 + $0xa8] sm:$0xff] %v14212
  %14251 = vst [vmem:[%s3 + $0xb0] sm:$0xff] %v14213
  %14252 = vst [vmem:[%s3 + $0xb8] sm:$0xff] %v14214
  %14253 = vst [vmem:[%s3 + $0xc0] sm:$0xff] %v14215
  %14254 = vst [vmem:[%s3 + $0xc8] sm:$0xff] %v14216
  %14255 = vst [vmem:[%s3 + $0xd0] sm:$0xff] %v14217
  %14256 = vst [vmem:[%s3 + $0xd8] sm:$0xff] %v14218
  %14257 = vst [vmem:[%s3 + $0xe0] sm:$0xff] %v14219
  %14258 = vst [vmem:[%s3 + $0xe8] sm:$0xff] %v14220
  %14259 = vst [vmem:[%s3 + $0xf0] sm:$0xff] %v14221
  %14260 = vst [vmem:[%s3 + $0xf8] sm:$0xff] %v14222
  %14261 = vst [vmem:[%s3 + $0x100] sm:$0xff] %v14223
  %14262 = vst [vmem:[%s3 + $0x108] sm:$0xff] %v14224
  %14263 = vst [vmem:[%s3 + $0x110] sm:$0xff] %v14225
  %14264 = vst [vmem:[%s3 + $0x118] sm:$0xff] %v14226
  %14265 = vst [vmem:[%s3 + $0x120] sm:$0xff] %v14227
  %14266 = vst [vmem:[%s3 + $0x128] sm:$0xff] %v14228
  // Predicated region
  $region14: #{model_forward.1} parent=0 // pred_check
    _
  $region15: #{model_forward.1} parent=0 // pred_check_branch
    %14268 = sbr.rel (0) target = $region17
  $region16: #{model_forward.1} parent=0 // pred_region
    _
  $region17: #{model_forward.1} parent=0 // pred_fallthru
    _
  // Predicated region
  $region18: #{model_forward.1} parent=0 // pred_check
    _
  $region19: #{model_forward.1} parent=0 // pred_check_branch
    %14270 = sbr.rel (0) target = $region21
  $region20: #{model_forward.1} parent=0 // pred_region
    _
  $region21: #{model_forward.1} parent=0 // pred_fallthru
    _

</llo_original>
